<compile_context>
chip_gen: v7x
topology: tpu7x:2x2x1
jax: 0.10.0
libtpu: 0.0.40
codegen_flags: <defaults>
</compile_context>

<pallas_src>
import math
from functools import partial

import jax
import jax.numpy as jnp
from jax.experimental import pallas as pl
from jax.experimental.pallas import tpu as pltpu


# -----------------------------------------------------------------------------
# Fused kernel
# -----------------------------------------------------------------------------
def _prediction_head_kernel(x_ref, wq_ref, wk_ref, wv_ref, wo_ref,
                            lng_ref, lnb_ref, w3_ref, bc_ref, o_ref, yn_ref,
                            *, n_heads, seq_len, n_rows):
    """Fused CrossScaleHead + PredictionHead (individual=False) forward.

    Shapes (B = bs * n_vars, G = n_heads * B):
      x_ref   : [B, L, D]     torch-style raw-reshaped input
      wq_ref  : [H, D, d_k]   per-head Q weight (1/sqrt(d_k) pre-folded)
      wk_ref  : [H, D, d_k]
      wv_ref  : [H, D, d_v]
      wo_ref  : [H, d_v, D]
      lng_ref : [1, 1, D]     LayerNorm gamma
      lnb_ref : [1, 1, D]     LayerNorm beta
      w3_ref  : [L, D, F]     fused cross-scale + flatten + head weight
      bc_ref  : [1, F]        fused bias
      o_ref   : [B, F]
      yn_ref  : [B, L, D]     VMEM scratch holding post-LayerNorm activations
    """
    B = n_rows
    x = x_ref[...]                                               # [B, L, D]

    # Fused (head x batch) axis g = h*B + b: x broadcast over heads, weights
    # broadcast over batch -- both as leading-dim concats in VMEM (no HBM copies).
    xg = jnp.concatenate([x] * n_heads, axis=0)                  # [G, L, D]

    def rep_over_batch(w):                                       # [H,...] -> [G,...]
        return jnp.concatenate(
            [piece for h in range(n_heads) for piece in [w[h:h + 1]] * B],
            axis=0)

    wqg = rep_over_batch(wq_ref[...])                            # [G, D, dk]
    wkg = rep_over_batch(wk_ref[...])                            # [G, D, dk]
    wvg = rep_over_batch(wv_ref[...])                            # [G, D, dv]
    wog = rep_over_batch(wo_ref[...])                            # [G, dv, D]

    # Q/K/V projections: one batched einsum each (no per-head loop, no lane slices).
    q = jnp.einsum('gld,gde->gle', xg, wqg,
                   preferred_element_type=jnp.float32)           # scale pre-folded
    k = jnp.einsum('gld,gde->gle', xg, wkg,
                   preferred_element_type=jnp.float32)
    v = jnp.einsum('gld,gde->gle', xg, wvg,
                   preferred_element_type=jnp.float32)

    # Scaled dot-product attention for all (head, batch) pairs at once.
    s = jnp.einsum('gie,gje->gij', q, k, preferred_element_type=jnp.float32)
    s = s - jnp.max(s, axis=-1, keepdims=True)
    p = jnp.exp(s)
    p = p * pl.reciprocal(jnp.sum(p, axis=-1, keepdims=True), approx=True)
    ctx = jnp.einsum('gij,gje->gie', p, v, preferred_element_type=jnp.float32)

    # Per-head output projection, then sum head contributions (leading slices).
    outg = jnp.einsum('gle,ged->gld', ctx, wog,
                      preferred_element_type=jnp.float32)        # [G, L, D]
    out = outg[0:B]
    for h in range(1, n_heads):
        out = out + outg[h * B:(h + 1) * B]                      # [B, L, D]

    # Residual + LayerNorm(d_model) (all VPU math in fp32).
    y = out + x
    mu = jnp.mean(y, axis=-1, keepdims=True)
    var = jnp.mean((y - mu) ** 2, axis=-1, keepdims=True)
    yn = (y - mu) * jax.lax.rsqrt(var + 1e-5)
    yn_ref[...] = yn * lng_ref[...] + lnb_ref[...]               # keep in VMEM scratch

    # Fused cross-scale linears + Flatten(-2) + head Linear:
    #   o[b, f] = sum_{l, d} yn[b, l, d] * w3[l, d, f] + bc[f]
    # computed as L small MXU matmuls accumulated in fp32; no [.., num_patch]
    # intermediate, no HBM round trip.
    acc = jnp.dot(yn_ref[:, 0, :], w3_ref[0],
                  preferred_element_type=jnp.float32)            # [B, F]
    for l in range(1, seq_len):
        acc = acc + jnp.dot(yn_ref[:, l, :], w3_ref[l],
                            preferred_element_type=jnp.float32)
    o_ref[...] = acc + bc_ref[...]


# -----------------------------------------------------------------------------
# Wrapper: weight preprocessing (layout-only) + single pallas_call
# -----------------------------------------------------------------------------
def prediction_head_forward(x, params, *, num_patch, forecast_len, n_heads,
                            d_k, d_v, shape_list):
    """PredictionHead forward: x [bs, L, n_vars, d_model] -> [bs, F, n_vars]."""
    bs, L, n_vars, d_model = x.shape
    assert L == sum(shape_list)
    B = bs * n_vars
    P, F, H = num_patch, forecast_len, n_heads

    # Raw reshape, exactly like torch's x.reshape(bs * n_vars, -1, d_model)
    # (a bitcast in HBM; intentionally mixes L and n_vars like the reference).
    xr = jnp.reshape(x, (B, L, d_model))

    # Per-head projection weights ([H, D, dk] etc.) -- NOT repeated over batch
    # (the batch broadcast happens in VMEM inside the kernel).  The 1/sqrt(d_k)
    # attention scale is folded into the Q weight here (weight-only transform).
    wq_h = (params['wq'] * (1.0 / math.sqrt(d_k))) \
        .reshape(d_model, H, d_k).transpose(1, 0, 2)                  # [H, D, dk]
    wk_h = params['wk'].reshape(d_model, H, d_k).transpose(1, 0, 2)   # [H, D, dk]
    wv_h = params['wv'].reshape(d_model, H, d_v).transpose(1, 0, 2)   # [H, D, dv]
    wo_h = params['wo'].reshape(H, d_v, d_model)                      # [H, dv, D]

    # Fuse linear_sep (W_i^T stacked along L, biases summed), Flatten(-2) and the
    # head Linear into a single weight.  Flat offset of attention-output element
    # (l, d) is k = l*D + d; the torch reshape reads that flat buffer as [D, L],
    # so row k of the combined matrix is
    #   sum_p w_sep[k % L, p] * w_head[(k // L)*P + p, :].
    w_sep = jnp.concatenate(list(params['w_sep_parts']), axis=0)      # [L, P]
    b_sep = sum(params['b_sep_parts'])                                # [P]
    w_head3 = params['w_head'].reshape(d_model, P, F)                 # [D, P, F]
    w_comb = jnp.einsum('lp,dpf->dlf', w_sep, w_head3)                # [D, L, F]
    w3 = w_comb.reshape(d_model * L, F).reshape(L, d_model, F)        # k -> (l, d)
    b_comb = (jnp.einsum('p,dpf->f', b_sep, w_head3)
              + params['b_head']).reshape(1, F)

    lng = params['ln_g'].reshape(1, 1, d_model)
    lnb = params['ln_b'].reshape(1, 1, d_model)

    kern = partial(_prediction_head_kernel, n_heads=H, seq_len=L, n_rows=B)
    # Single grid point: every operand gets a full-array block resident in VMEM.
    y = pl.pallas_call(
        kern,
        out_shape=jax.ShapeDtypeStruct((B, F), jnp.float32),
        scratch_shapes=[pltpu.VMEM((B, L, d_model), jnp.float32)],
    )(xr, wq_h, wk_h, wv_h, wo_h, lng, lnb, w3, b_comb)

    # [bs*n_vars, F] -> [bs, n_vars, F] -> [bs, F, n_vars] (== transpose(2, 1)).
    return jnp.transpose(jnp.reshape(y, (bs, n_vars, F)), (0, 2, 1))


# -----------------------------------------------------------------------------
# Pure-JAX reference that mirrors the PyTorch module op-for-op (same assumed
# MHA internals); used to validate the fused kernel numerically.
# -----------------------------------------------------------------------------
def reference_forward(x, params, *, num_patch, forecast_len, n_heads,
                      d_k, d_v, shape_list):
    bs, L, n_vars, d_model = x.shape
    idx = [0]
    for s_i in shape_list:
        idx.append(idx[-1] + s_i)

    xr = jnp.reshape(x, (bs * n_vars, -1, d_model))
    q = xr @ params['wq']
    k = xr @ params['wk']
    v = xr @ params['wv']
    heads = []
    for h in range(n_heads):
        qh = q[..., h * d_k:(h + 1) * d_k]
        kh = k[..., h * d_k:(h + 1) * d_k]
        vh = v[..., h * d_v:(h + 1) * d_v]
        s = jnp.einsum('bie,bje->bij', qh, kh) / math.sqrt(d_k)
        p = jax.nn.softmax(s, axis=-1)
        heads.append(jnp.einsum('bij,bje->bie', p, vh))
    ctx = jnp.concatenate(heads, axis=-1)
    y = ctx @ params['wo'] + xr
    mu = jnp.mean(y, axis=-1, keepdims=True)
    var = jnp.mean((y - mu) ** 2, axis=-1, keepdims=True)
    yn = (y - mu) / jnp.sqrt(var + 1e-5) * params['ln_g'] + params['ln_b']

    xh = jnp.reshape(yn, (bs, n_vars, d_model, -1))       # torch raw reshape
    z = 0.0
    for i in range(len(shape_list)):
        sl = xh[..., idx[i]:idx[i + 1]]
        z = z + jnp.einsum('bvds,sp->bvdp', sl, params['w_sep_parts'][i]) \
              + params['b_sep_parts'][i]
    zf = jnp.reshape(z, (bs, n_vars, d_model * num_patch))
    out = zf @ params['w_head'] + params['b_head']
    return jnp.transpose(out, (0, 2, 1))


# -----------------------------------------------------------------------------
if __name__ == "__main__":
    bs, n_vars, d_model = 2, 3, 32
    num_patch, n_hierarchy = 8, 2
    d_k = d_v = 8
    n_heads = 4
    forecast_len = 16
    shape_list = tuple(num_patch // 2 ** i for i in range(n_hierarchy))  # (8, 4)
    L = sum(shape_list)                                                  # 12

    key = jax.random.PRNGKey(0)
    ks = jax.random.split(key, 12)

    def unif(k, shape, fan_in):
        bound = 1.0 / math.sqrt(fan_in)
        return jax.random.uniform(k, shape, jnp.float32, -bound, bound)

    params = {
        "wq": unif(ks[0], (d_model, n_heads * d_k), d_model),
        "wk": unif(ks[1], (d_model, n_heads * d_k), d_model),
        "wv": unif(ks[2], (d_model, n_heads * d_v), d_model),
        "wo": unif(ks[3], (n_heads * d_v, d_model), n_heads * d_v),
        "ln_g": 1.0 + 0.1 * jax.random.normal(ks[4], (d_model,), jnp.float32),
        "ln_b": 0.1 * jax.random.normal(ks[5], (d_model,), jnp.float32),
        "w_head": unif(ks[6], (d_model * num_patch, forecast_len),
                       d_model * num_patch),
        "b_head": unif(ks[7], (forecast_len,), d_model * num_patch),
    }
    w_parts, b_parts = [], []
    kk = jax.random.split(ks[8], 2 * n_hierarchy)
    for i, s_i in enumerate(shape_list):
        w_parts.append(unif(kk[2 * i], (s_i, num_patch), s_i))    # = W_i^T
        b_parts.append(unif(kk[2 * i + 1], (num_patch,), s_i))
    params["w_sep_parts"] = w_parts
    params["b_sep_parts"] = b_parts

    x = jax.random.normal(ks[9], (bs, L, n_vars, d_model), jnp.float32)

    cfg = dict(num_patch=num_patch, forecast_len=forecast_len, n_heads=n_heads,
               d_k=d_k, d_v=d_v, shape_list=shape_list)

    fwd = jax.jit(partial(prediction_head_forward, **cfg))
    out = jax.block_until_ready(fwd(x, params))

    assert out.shape == (bs, forecast_len, n_vars), out.shape
    assert bool(jnp.all(jnp.isfinite(out)))

    ref = reference_forward(x, params, **cfg)
    max_err = float(jnp.max(jnp.abs(out - ref)))
    assert max_err < 2e-2, f"mismatch vs reference: max abs err {max_err}"

    print("KERNEL_OK")
</pallas_src>

<mosaic_0001>
module attributes {stable_mosaic.version = 11 : i64} {
  func.func @_prediction_head_kernel(%arg0: memref<6x12x32xf32, #tpu.memory_space<vmem>>, %arg1: memref<4x32x8xf32, #tpu.memory_space<vmem>>, %arg2: memref<4x32x8xf32, #tpu.memory_space<vmem>>, %arg3: memref<4x32x8xf32, #tpu.memory_space<vmem>>, %arg4: memref<4x8x32xf32, #tpu.memory_space<vmem>>, %arg5: memref<1x1x32xf32, #tpu.memory_space<vmem>>, %arg6: memref<1x1x32xf32, #tpu.memory_space<vmem>>, %arg7: memref<12x32x16xf32, #tpu.memory_space<vmem>>, %arg8: memref<1x16xf32, #tpu.memory_space<vmem>>, %arg9: memref<6x16xf32, #tpu.memory_space<vmem>>, %arg10: memref<6x12x32xf32, #tpu.memory_space<vmem>>) attributes {dimension_semantics = [], scalar_prefetch = 0 : i64, scratch_operands = 1 : i64, tpu.core_type = #tpu.core_type<tc>} {
    %c0 = arith.constant 0 : index
    %c0_0 = arith.constant 0 : index
    %c0_1 = arith.constant 0 : index
    %0 = vector.load %arg0[%c0, %c0_0, %c0_1] : memref<6x12x32xf32, #tpu.memory_space<vmem>>, vector<6x12x32xf32>
    %1 = tpu.concatenate %0, %0, %0, %0 in 0 : vector<6x12x32xf32>, vector<6x12x32xf32>, vector<6x12x32xf32>, vector<6x12x32xf32> -> vector<24x12x32xf32>
    %c0_2 = arith.constant 0 : index
    %c0_3 = arith.constant 0 : index
    %c0_4 = arith.constant 0 : index
    %2 = vector.load %arg1[%c0_2, %c0_3, %c0_4] : memref<4x32x8xf32, #tpu.memory_space<vmem>>, vector<4x32x8xf32>
    %3 = vector.extract_strided_slice %2 {offsets = [0, 0, 0], sizes = [1, 32, 8], strides = [1, 1, 1]} : vector<4x32x8xf32> to vector<1x32x8xf32>
    %4 = vector.extract_strided_slice %2 {offsets = [1, 0, 0], sizes = [1, 32, 8], strides = [1, 1, 1]} : vector<4x32x8xf32> to vector<1x32x8xf32>
    %5 = vector.extract_strided_slice %2 {offsets = [2, 0, 0], sizes = [1, 32, 8], strides = [1, 1, 1]} : vector<4x32x8xf32> to vector<1x32x8xf32>
    %6 = vector.extract_strided_slice %2 {offsets = [3, 0, 0], sizes = [1, 32, 8], strides = [1, 1, 1]} : vector<4x32x8xf32> to vector<1x32x8xf32>
    %7 = tpu.concatenate %3, %3, %3, %3, %3, %3, %4, %4, %4, %4, %4, %4, %5, %5, %5, %5 in 0 : vector<1x32x8xf32>, vector<1x32x8xf32>, vector<1x32x8xf32>, vector<1x32x8xf32>, vector<1x32x8xf32>, vector<1x32x8xf32>, vector<1x32x8xf32>, vector<1x32x8xf32>, vector<1x32x8xf32>, vector<1x32x8xf32>, vector<1x32x8xf32>, vector<1x32x8xf32>, vector<1x32x8xf32>, vector<1x32x8xf32>, vector<1x32x8xf32>, vector<1x32x8xf32> -> vector<16x32x8xf32>
    %8 = tpu.concatenate %5, %5, %6, %6, %6, %6, %6, %6 in 0 : vector<1x32x8xf32>, vector<1x32x8xf32>, vector<1x32x8xf32>, vector<1x32x8xf32>, vector<1x32x8xf32>, vector<1x32x8xf32>, vector<1x32x8xf32>, vector<1x32x8xf32> -> vector<8x32x8xf32>
    %9 = tpu.concatenate %7, %8 in 0 : vector<16x32x8xf32>, vector<8x32x8xf32> -> vector<24x32x8xf32>
    %c0_5 = arith.constant 0 : index
    %c0_6 = arith.constant 0 : index
    %c0_7 = arith.constant 0 : index
    %10 = vector.load %arg2[%c0_5, %c0_6, %c0_7] : memref<4x32x8xf32, #tpu.memory_space<vmem>>, vector<4x32x8xf32>
    %11 = vector.extract_strided_slice %10 {offsets = [0, 0, 0], sizes = [1, 32, 8], strides = [1, 1, 1]} : vector<4x32x8xf32> to vector<1x32x8xf32>
    %12 = vector.extract_strided_slice %10 {offsets = [1, 0, 0], sizes = [1, 32, 8], strides = [1, 1, 1]} : vector<4x32x8xf32> to vector<1x32x8xf32>
    %13 = vector.extract_strided_slice %10 {offsets = [2, 0, 0], sizes = [1, 32, 8], strides = [1, 1, 1]} : vector<4x32x8xf32> to vector<1x32x8xf32>
    %14 = vector.extract_strided_slice %10 {offsets = [3, 0, 0], sizes = [1, 32, 8], strides = [1, 1, 1]} : vector<4x32x8xf32> to vector<1x32x8xf32>
    %15 = tpu.concatenate %11, %11, %11, %11, %11, %11, %12, %12, %12, %12, %12, %12, %13, %13, %13, %13 in 0 : vector<1x32x8xf32>, vector<1x32x8xf32>, vector<1x32x8xf32>, vector<1x32x8xf32>, vector<1x32x8xf32>, vector<1x32x8xf32>, vector<1x32x8xf32>, vector<1x32x8xf32>, vector<1x32x8xf32>, vector<1x32x8xf32>, vector<1x32x8xf32>, vector<1x32x8xf32>, vector<1x32x8xf32>, vector<1x32x8xf32>, vector<1x32x8xf32>, vector<1x32x8xf32> -> vector<16x32x8xf32>
    %16 = tpu.concatenate %13, %13, %14, %14, %14, %14, %14, %14 in 0 : vector<1x32x8xf32>, vector<1x32x8xf32>, vector<1x32x8xf32>, vector<1x32x8xf32>, vector<1x32x8xf32>, vector<1x32x8xf32>, vector<1x32x8xf32>, vector<1x32x8xf32> -> vector<8x32x8xf32>
    %17 = tpu.concatenate %15, %16 in 0 : vector<16x32x8xf32>, vector<8x32x8xf32> -> vector<24x32x8xf32>
    %c0_8 = arith.constant 0 : index
    %c0_9 = arith.constant 0 : index
    %c0_10 = arith.constant 0 : index
    %18 = vector.load %arg3[%c0_8, %c0_9, %c0_10] : memref<4x32x8xf32, #tpu.memory_space<vmem>>, vector<4x32x8xf32>
    %19 = vector.extract_strided_slice %18 {offsets = [0, 0, 0], sizes = [1, 32, 8], strides = [1, 1, 1]} : vector<4x32x8xf32> to vector<1x32x8xf32>
    %20 = vector.extract_strided_slice %18 {offsets = [1, 0, 0], sizes = [1, 32, 8], strides = [1, 1, 1]} : vector<4x32x8xf32> to vector<1x32x8xf32>
    %21 = vector.extract_strided_slice %18 {offsets = [2, 0, 0], sizes = [1, 32, 8], strides = [1, 1, 1]} : vector<4x32x8xf32> to vector<1x32x8xf32>
    %22 = vector.extract_strided_slice %18 {offsets = [3, 0, 0], sizes = [1, 32, 8], strides = [1, 1, 1]} : vector<4x32x8xf32> to vector<1x32x8xf32>
    %23 = tpu.concatenate %19, %19, %19, %19, %19, %19, %20, %20, %20, %20, %20, %20, %21, %21, %21, %21 in 0 : vector<1x32x8xf32>, vector<1x32x8xf32>, vector<1x32x8xf32>, vector<1x32x8xf32>, vector<1x32x8xf32>, vector<1x32x8xf32>, vector<1x32x8xf32>, vector<1x32x8xf32>, vector<1x32x8xf32>, vector<1x32x8xf32>, vector<1x32x8xf32>, vector<1x32x8xf32>, vector<1x32x8xf32>, vector<1x32x8xf32>, vector<1x32x8xf32>, vector<1x32x8xf32> -> vector<16x32x8xf32>
    %24 = tpu.concatenate %21, %21, %22, %22, %22, %22, %22, %22 in 0 : vector<1x32x8xf32>, vector<1x32x8xf32>, vector<1x32x8xf32>, vector<1x32x8xf32>, vector<1x32x8xf32>, vector<1x32x8xf32>, vector<1x32x8xf32>, vector<1x32x8xf32> -> vector<8x32x8xf32>
    %25 = tpu.concatenate %23, %24 in 0 : vector<16x32x8xf32>, vector<8x32x8xf32> -> vector<24x32x8xf32>
    %c0_11 = arith.constant 0 : index
    %c0_12 = arith.constant 0 : index
    %c0_13 = arith.constant 0 : index
    %26 = vector.load %arg4[%c0_11, %c0_12, %c0_13] : memref<4x8x32xf32, #tpu.memory_space<vmem>>, vector<4x8x32xf32>
    %27 = vector.extract_strided_slice %26 {offsets = [0, 0, 0], sizes = [1, 8, 32], strides = [1, 1, 1]} : vector<4x8x32xf32> to vector<1x8x32xf32>
    %28 = vector.extract_strided_slice %26 {offsets = [1, 0, 0], sizes = [1, 8, 32], strides = [1, 1, 1]} : vector<4x8x32xf32> to vector<1x8x32xf32>
    %29 = vector.extract_strided_slice %26 {offsets = [2, 0, 0], sizes = [1, 8, 32], strides = [1, 1, 1]} : vector<4x8x32xf32> to vector<1x8x32xf32>
    %30 = vector.extract_strided_slice %26 {offsets = [3, 0, 0], sizes = [1, 8, 32], strides = [1, 1, 1]} : vector<4x8x32xf32> to vector<1x8x32xf32>
    %31 = tpu.concatenate %27, %27, %27, %27, %27, %27, %28, %28, %28, %28, %28, %28, %29, %29, %29, %29 in 0 : vector<1x8x32xf32>, vector<1x8x32xf32>, vector<1x8x32xf32>, vector<1x8x32xf32>, vector<1x8x32xf32>, vector<1x8x32xf32>, vector<1x8x32xf32>, vector<1x8x32xf32>, vector<1x8x32xf32>, vector<1x8x32xf32>, vector<1x8x32xf32>, vector<1x8x32xf32>, vector<1x8x32xf32>, vector<1x8x32xf32>, vector<1x8x32xf32>, vector<1x8x32xf32> -> vector<16x8x32xf32>
    %32 = tpu.concatenate %29, %29, %30, %30, %30, %30, %30, %30 in 0 : vector<1x8x32xf32>, vector<1x8x32xf32>, vector<1x8x32xf32>, vector<1x8x32xf32>, vector<1x8x32xf32>, vector<1x8x32xf32>, vector<1x8x32xf32>, vector<1x8x32xf32> -> vector<8x8x32xf32>
    %33 = tpu.concatenate %31, %32 in 0 : vector<16x8x32xf32>, vector<8x8x32xf32> -> vector<24x8x32xf32>
    "tpu.trace_start"() <{level = 10 : i32, message = "gld,gde->gle"}> : () -> ()
    %cst = arith.constant dense<0.000000e+00> : vector<24x12x8xf32>
    %34 = tpu.matmul %1, %9, %cst {dimension_numbers = #tpu.dot_dimension_numbers<[2], [1], [1], [2], [0, 0, 0, 1, 1, 2], [0], [0]>} : vector<24x12x32xf32>, vector<24x32x8xf32>, vector<24x12x8xf32> -> vector<24x12x8xf32>
    %cst_14 = arith.constant dense<0.000000e+00> : vector<24x12x8xf32>
    %35 = tpu.matmul %1, %17, %cst_14 {dimension_numbers = #tpu.dot_dimension_numbers<[2], [1], [1], [2], [0, 0, 0, 1, 1, 2], [0], [0]>} : vector<24x12x32xf32>, vector<24x32x8xf32>, vector<24x12x8xf32> -> vector<24x12x8xf32>
    %cst_15 = arith.constant dense<0.000000e+00> : vector<24x12x8xf32>
    %36 = tpu.matmul %1, %25, %cst_15 {dimension_numbers = #tpu.dot_dimension_numbers<[2], [1], [1], [2], [0, 0, 0, 1, 1, 2], [0], [0]>} : vector<24x12x32xf32>, vector<24x32x8xf32>, vector<24x12x8xf32> -> vector<24x12x8xf32>
    "tpu.trace_stop"() : () -> ()
    "tpu.trace_start"() <{level = 10 : i32, message = "gie,gje->gij"}> : () -> ()
    %cst_16 = arith.constant dense<0.000000e+00> : vector<24x12x12xf32>
    %37 = tpu.matmul %34, %35, %cst_16 {dimension_numbers = #tpu.dot_dimension_numbers<[2], [2], [1], [1], [0, 0, 0, 1, 1, 1], [0], [0]>} : vector<24x12x8xf32>, vector<24x12x8xf32>, vector<24x12x12xf32> -> vector<24x12x12xf32>
    "tpu.trace_stop"() : () -> ()
    %cst_17 = arith.constant dense<0xFF800000> : vector<24x12xf32>
    %38 = vector.multi_reduction <maximumf>, %37, %cst_17 [2] : vector<24x12x12xf32> to vector<24x12xf32>
    %39 = vector.shape_cast %38 : vector<24x12xf32> to vector<24x12x1xf32>
    %40 = vector.broadcast %39 : vector<24x12x1xf32> to vector<24x12x12xf32>
    %41 = arith.subf %37, %40 : vector<24x12x12xf32>
    %42 = math.exp %41 : vector<24x12x12xf32>
    %cst_18 = arith.constant dense<0.000000e+00> : vector<24x12xf32>
    %43 = vector.multi_reduction <add>, %42, %cst_18 [2] : vector<24x12x12xf32> to vector<24x12xf32>
    %44 = vector.shape_cast %43 : vector<24x12xf32> to vector<24x12x1xf32>
    %45 = tpu.reciprocal %44 {approx = true} : vector<24x12x1xf32> -> vector<24x12x1xf32>
    %46 = vector.broadcast %45 : vector<24x12x1xf32> to vector<24x12x12xf32>
    %47 = arith.mulf %42, %46 : vector<24x12x12xf32>
    "tpu.trace_start"() <{level = 10 : i32, message = "gij,gje->gie"}> : () -> ()
    %cst_19 = arith.constant dense<0.000000e+00> : vector<24x12x8xf32>
    %48 = tpu.matmul %47, %36, %cst_19 {dimension_numbers = #tpu.dot_dimension_numbers<[2], [1], [1], [2], [0, 0, 0, 1, 1, 2], [0], [0]>} : vector<24x12x12xf32>, vector<24x12x8xf32>, vector<24x12x8xf32> -> vector<24x12x8xf32>
    "tpu.trace_stop"() : () -> ()
    "tpu.trace_start"() <{level = 10 : i32, message = "gle,ged->gld"}> : () -> ()
    %cst_20 = arith.constant dense<0.000000e+00> : vector<24x12x32xf32>
    %49 = tpu.matmul %48, %33, %cst_20 {dimension_numbers = #tpu.dot_dimension_numbers<[2], [1], [1], [2], [0, 0, 0, 1, 1, 2], [0], [0]>} : vector<24x12x8xf32>, vector<24x8x32xf32>, vector<24x12x32xf32> -> vector<24x12x32xf32>
    "tpu.trace_stop"() : () -> ()
    %50 = vector.extract_strided_slice %49 {offsets = [0, 0, 0], sizes = [6, 12, 32], strides = [1, 1, 1]} : vector<24x12x32xf32> to vector<6x12x32xf32>
    %51 = vector.extract_strided_slice %49 {offsets = [6, 0, 0], sizes = [6, 12, 32], strides = [1, 1, 1]} : vector<24x12x32xf32> to vector<6x12x32xf32>
    %52 = arith.addf %50, %51 : vector<6x12x32xf32>
    %53 = vector.extract_strided_slice %49 {offsets = [12, 0, 0], sizes = [6, 12, 32], strides = [1, 1, 1]} : vector<24x12x32xf32> to vector<6x12x32xf32>
    %54 = arith.addf %52, %53 : vector<6x12x32xf32>
    %55 = vector.extract_strided_slice %49 {offsets = [18, 0, 0], sizes = [6, 12, 32], strides = [1, 1, 1]} : vector<24x12x32xf32> to vector<6x12x32xf32>
    %56 = arith.addf %54, %55 : vector<6x12x32xf32>
    %57 = arith.addf %56, %0 : vector<6x12x32xf32>
    %cst_21 = arith.constant dense<0.000000e+00> : vector<6x12xf32>
    %58 = vector.multi_reduction <add>, %57, %cst_21 [2] : vector<6x12x32xf32> to vector<6x12xf32>
    %59 = vector.shape_cast %58 : vector<6x12xf32> to vector<6x12x1xf32>
    %cst_22 = arith.constant 3.200000e+01 : f32
    %60 = vector.broadcast %cst_22 : f32 to vector<6x12x1xf32>
    %61 = arith.divf %59, %60 : vector<6x12x1xf32>
    %62 = vector.broadcast %61 : vector<6x12x1xf32> to vector<6x12x32xf32>
    %63 = arith.subf %57, %62 : vector<6x12x32xf32>
    %64 = arith.mulf %63, %63 : vector<6x12x32xf32>
    %cst_23 = arith.constant dense<0.000000e+00> : vector<6x12xf32>
    %65 = vector.multi_reduction <add>, %64, %cst_23 [2] : vector<6x12x32xf32> to vector<6x12xf32>
    %66 = vector.shape_cast %65 : vector<6x12xf32> to vector<6x12x1xf32>
    %cst_24 = arith.constant 3.200000e+01 : f32
    %67 = vector.broadcast %cst_24 : f32 to vector<6x12x1xf32>
    %68 = arith.divf %66, %67 : vector<6x12x1xf32>
    %69 = vector.broadcast %61 : vector<6x12x1xf32> to vector<6x12x32xf32>
    %70 = arith.subf %57, %69 : vector<6x12x32xf32>
    %cst_25 = arith.constant 9.99999974E-6 : f32
    %71 = vector.broadcast %cst_25 : f32 to vector<6x12x1xf32>
    %72 = arith.addf %68, %71 : vector<6x12x1xf32>
    %73 = math.rsqrt %72 : vector<6x12x1xf32>
    %74 = vector.broadcast %73 : vector<6x12x1xf32> to vector<6x12x32xf32>
    %75 = arith.mulf %70, %74 : vector<6x12x32xf32>
    %c0_26 = arith.constant 0 : index
    %c0_27 = arith.constant 0 : index
    %c0_28 = arith.constant 0 : index
    %76 = vector.load %arg5[%c0_26, %c0_27, %c0_28] : memref<1x1x32xf32, #tpu.memory_space<vmem>>, vector<1x1x32xf32>
    %77 = vector.broadcast %76 : vector<1x1x32xf32> to vector<6x12x32xf32>
    %78 = arith.mulf %75, %77 : vector<6x12x32xf32>
    %c0_29 = arith.constant 0 : index
    %c0_30 = arith.constant 0 : index
    %c0_31 = arith.constant 0 : index
    %79 = vector.load %arg6[%c0_29, %c0_30, %c0_31] : memref<1x1x32xf32, #tpu.memory_space<vmem>>, vector<1x1x32xf32>
    %80 = vector.broadcast %79 : vector<1x1x32xf32> to vector<6x12x32xf32>
    %81 = arith.addf %78, %80 : vector<6x12x32xf32>
    %c0_32 = arith.constant 0 : index
    %c0_33 = arith.constant 0 : index
    %c0_34 = arith.constant 0 : index
    %82 = vector.load %arg10[%c0_32, %c0_33, %c0_34] : memref<6x12x32xf32, #tpu.memory_space<vmem>>, vector<6x12x32xf32>
    tpu.vector_store %arg10[%c0_32, %c0_33, %c0_34], %81 {strides = array<i32>} : memref<6x12x32xf32, #tpu.memory_space<vmem>>, vector<6x12x32xf32>,
    %c0_35 = arith.constant 0 : index
    %c0_36 = arith.constant 0 : index
    %c0_37 = arith.constant 0 : index
    %83 = vector.load %arg10[%c0_35, %c0_36, %c0_37] : memref<6x12x32xf32, #tpu.memory_space<vmem>>, vector<6x1x32xf32>
    %84 = vector.shape_cast %83 : vector<6x1x32xf32> to vector<6x32xf32>
    %c0_38 = arith.constant 0 : index
    %c0_39 = arith.constant 0 : index
    %c0_40 = arith.constant 0 : index
    %85 = vector.load %arg7[%c0_38, %c0_39, %c0_40] : memref<12x32x16xf32, #tpu.memory_space<vmem>>, vector<1x32x16xf32>
    %86 = vector.shape_cast %85 : vector<1x32x16xf32> to vector<32x16xf32>
    %cst_41 = arith.constant dense<0.000000e+00> : vector<6x16xf32>
    %87 = tpu.matmul %84, %86, %cst_41 {dimension_numbers = #tpu.dot_dimension_numbers<[1], [0], [0], [1], [0, 0, 1, 1], [], []>} : vector<6x32xf32>, vector<32x16xf32>, vector<6x16xf32> -> vector<6x16xf32>
    %c0_42 = arith.constant 0 : index
    %c1 = arith.constant 1 : index
    %c0_43 = arith.constant 0 : index
    %88 = vector.load %arg10[%c0_42, %c1, %c0_43] : memref<6x12x32xf32, #tpu.memory_space<vmem>>, vector<6x1x32xf32>
    %89 = vector.shape_cast %88 : vector<6x1x32xf32> to vector<6x32xf32>
    %c1_44 = arith.constant 1 : index
    %c0_45 = arith.constant 0 : index
    %c0_46 = arith.constant 0 : index
    %90 = vector.load %arg7[%c1_44, %c0_45, %c0_46] : memref<12x32x16xf32, #tpu.memory_space<vmem>>, vector<1x32x16xf32>
    %91 = vector.shape_cast %90 : vector<1x32x16xf32> to vector<32x16xf32>
    %cst_47 = arith.constant dense<0.000000e+00> : vector<6x16xf32>
    %92 = tpu.matmul %89, %91, %cst_47 {dimension_numbers = #tpu.dot_dimension_numbers<[1], [0], [0], [1], [0, 0, 1, 1], [], []>} : vector<6x32xf32>, vector<32x16xf32>, vector<6x16xf32> -> vector<6x16xf32>
    %93 = arith.addf %87, %92 : vector<6x16xf32>
    %c0_48 = arith.constant 0 : index
    %c2 = arith.constant 2 : index
    %c0_49 = arith.constant 0 : index
    %94 = vector.load %arg10[%c0_48, %c2, %c0_49] : memref<6x12x32xf32, #tpu.memory_space<vmem>>, vector<6x1x32xf32>
    %95 = vector.shape_cast %94 : vector<6x1x32xf32> to vector<6x32xf32>
    %c2_50 = arith.constant 2 : index
    %c0_51 = arith.constant 0 : index
    %c0_52 = arith.constant 0 : index
    %96 = vector.load %arg7[%c2_50, %c0_51, %c0_52] : memref<12x32x16xf32, #tpu.memory_space<vmem>>, vector<1x32x16xf32>
    %97 = vector.shape_cast %96 : vector<1x32x16xf32> to vector<32x16xf32>
    %cst_53 = arith.constant dense<0.000000e+00> : vector<6x16xf32>
    %98 = tpu.matmul %95, %97, %cst_53 {dimension_numbers = #tpu.dot_dimension_numbers<[1], [0], [0], [1], [0, 0, 1, 1], [], []>} : vector<6x32xf32>, vector<32x16xf32>, vector<6x16xf32> -> vector<6x16xf32>
    %99 = arith.addf %93, %98 : vector<6x16xf32>
    %c0_54 = arith.constant 0 : index
    %c3 = arith.constant 3 : index
    %c0_55 = arith.constant 0 : index
    %100 = vector.load %arg10[%c0_54, %c3, %c0_55] : memref<6x12x32xf32, #tpu.memory_space<vmem>>, vector<6x1x32xf32>
    %101 = vector.shape_cast %100 : vector<6x1x32xf32> to vector<6x32xf32>
    %c3_56 = arith.constant 3 : index
    %c0_57 = arith.constant 0 : index
    %c0_58 = arith.constant 0 : index
    %102 = vector.load %arg7[%c3_56, %c0_57, %c0_58] : memref<12x32x16xf32, #tpu.memory_space<vmem>>, vector<1x32x16xf32>
    %103 = vector.shape_cast %102 : vector<1x32x16xf32> to vector<32x16xf32>
    %cst_59 = arith.constant dense<0.000000e+00> : vector<6x16xf32>
    %104 = tpu.matmul %101, %103, %cst_59 {dimension_numbers = #tpu.dot_dimension_numbers<[1], [0], [0], [1], [0, 0, 1, 1], [], []>} : vector<6x32xf32>, vector<32x16xf32>, vector<6x16xf32> -> vector<6x16xf32>
    %105 = arith.addf %99, %104 : vector<6x16xf32>
    %c0_60 = arith.constant 0 : index
    %c4 = arith.constant 4 : index
    %c0_61 = arith.constant 0 : index
    %106 = vector.load %arg10[%c0_60, %c4, %c0_61] : memref<6x12x32xf32, #tpu.memory_space<vmem>>, vector<6x1x32xf32>
    %107 = vector.shape_cast %106 : vector<6x1x32xf32> to vector<6x32xf32>
    %c4_62 = arith.constant 4 : index
    %c0_63 = arith.constant 0 : index
    %c0_64 = arith.constant 0 : index
    %108 = vector.load %arg7[%c4_62, %c0_63, %c0_64] : memref<12x32x16xf32, #tpu.memory_space<vmem>>, vector<1x32x16xf32>
    %109 = vector.shape_cast %108 : vector<1x32x16xf32> to vector<32x16xf32>
    %cst_65 = arith.constant dense<0.000000e+00> : vector<6x16xf32>
    %110 = tpu.matmul %107, %109, %cst_65 {dimension_numbers = #tpu.dot_dimension_numbers<[1], [0], [0], [1], [0, 0, 1, 1], [], []>} : vector<6x32xf32>, vector<32x16xf32>, vector<6x16xf32> -> vector<6x16xf32>
    %111 = arith.addf %105, %110 : vector<6x16xf32>
    %c0_66 = arith.constant 0 : index
    %c5 = arith.constant 5 : index
    %c0_67 = arith.constant 0 : index
    %112 = vector.load %arg10[%c0_66, %c5, %c0_67] : memref<6x12x32xf32, #tpu.memory_space<vmem>>, vector<6x1x32xf32>
    %113 = vector.shape_cast %112 : vector<6x1x32xf32> to vector<6x32xf32>
    %c5_68 = arith.constant 5 : index
    %c0_69 = arith.constant 0 : index
    %c0_70 = arith.constant 0 : index
    %114 = vector.load %arg7[%c5_68, %c0_69, %c0_70] : memref<12x32x16xf32, #tpu.memory_space<vmem>>, vector<1x32x16xf32>
    %115 = vector.shape_cast %114 : vector<1x32x16xf32> to vector<32x16xf32>
    %cst_71 = arith.constant dense<0.000000e+00> : vector<6x16xf32>
    %116 = tpu.matmul %113, %115, %cst_71 {dimension_numbers = #tpu.dot_dimension_numbers<[1], [0], [0], [1], [0, 0, 1, 1], [], []>} : vector<6x32xf32>, vector<32x16xf32>, vector<6x16xf32> -> vector<6x16xf32>
    %117 = arith.addf %111, %116 : vector<6x16xf32>
    %c0_72 = arith.constant 0 : index
    %c6 = arith.constant 6 : index
    %c0_73 = arith.constant 0 : index
    %118 = vector.load %arg10[%c0_72, %c6, %c0_73] : memref<6x12x32xf32, #tpu.memory_space<vmem>>, vector<6x1x32xf32>
    %119 = vector.shape_cast %118 : vector<6x1x32xf32> to vector<6x32xf32>
    %c6_74 = arith.constant 6 : index
    %c0_75 = arith.constant 0 : index
    %c0_76 = arith.constant 0 : index
    %120 = vector.load %arg7[%c6_74, %c0_75, %c0_76] : memref<12x32x16xf32, #tpu.memory_space<vmem>>, vector<1x32x16xf32>
    %121 = vector.shape_cast %120 : vector<1x32x16xf32> to vector<32x16xf32>
    %cst_77 = arith.constant dense<0.000000e+00> : vector<6x16xf32>
    %122 = tpu.matmul %119, %121, %cst_77 {dimension_numbers = #tpu.dot_dimension_numbers<[1], [0], [0], [1], [0, 0, 1, 1], [], []>} : vector<6x32xf32>, vector<32x16xf32>, vector<6x16xf32> -> vector<6x16xf32>
    %123 = arith.addf %117, %122 : vector<6x16xf32>
    %c0_78 = arith.constant 0 : index
    %c7 = arith.constant 7 : index
    %c0_79 = arith.constant 0 : index
    %124 = vector.load %arg10[%c0_78, %c7, %c0_79] : memref<6x12x32xf32, #tpu.memory_space<vmem>>, vector<6x1x32xf32>
    %125 = vector.shape_cast %124 : vector<6x1x32xf32> to vector<6x32xf32>
    %c7_80 = arith.constant 7 : index
    %c0_81 = arith.constant 0 : index
    %c0_82 = arith.constant 0 : index
    %126 = vector.load %arg7[%c7_80, %c0_81, %c0_82] : memref<12x32x16xf32, #tpu.memory_space<vmem>>, vector<1x32x16xf32>
    %127 = vector.shape_cast %126 : vector<1x32x16xf32> to vector<32x16xf32>
    %cst_83 = arith.constant dense<0.000000e+00> : vector<6x16xf32>
    %128 = tpu.matmul %125, %127, %cst_83 {dimension_numbers = #tpu.dot_dimension_numbers<[1], [0], [0], [1], [0, 0, 1, 1], [], []>} : vector<6x32xf32>, vector<32x16xf32>, vector<6x16xf32> -> vector<6x16xf32>
    %129 = arith.addf %123, %128 : vector<6x16xf32>
    %c0_84 = arith.constant 0 : index
    %c8 = arith.constant 8 : index
    %c0_85 = arith.constant 0 : index
    %130 = vector.load %arg10[%c0_84, %c8, %c0_85] : memref<6x12x32xf32, #tpu.memory_space<vmem>>, vector<6x1x32xf32>
    %131 = vector.shape_cast %130 : vector<6x1x32xf32> to vector<6x32xf32>
    %c8_86 = arith.constant 8 : index
    %c0_87 = arith.constant 0 : index
    %c0_88 = arith.constant 0 : index
    %132 = vector.load %arg7[%c8_86, %c0_87, %c0_88] : memref<12x32x16xf32, #tpu.memory_space<vmem>>, vector<1x32x16xf32>
    %133 = vector.shape_cast %132 : vector<1x32x16xf32> to vector<32x16xf32>
    %cst_89 = arith.constant dense<0.000000e+00> : vector<6x16xf32>
    %134 = tpu.matmul %131, %133, %cst_89 {dimension_numbers = #tpu.dot_dimension_numbers<[1], [0], [0], [1], [0, 0, 1, 1], [], []>} : vector<6x32xf32>, vector<32x16xf32>, vector<6x16xf32> -> vector<6x16xf32>
    %135 = arith.addf %129, %134 : vector<6x16xf32>
    %c0_90 = arith.constant 0 : index
    %c9 = arith.constant 9 : index
    %c0_91 = arith.constant 0 : index
    %136 = vector.load %arg10[%c0_90, %c9, %c0_91] : memref<6x12x32xf32, #tpu.memory_space<vmem>>, vector<6x1x32xf32>
    %137 = vector.shape_cast %136 : vector<6x1x32xf32> to vector<6x32xf32>
    %c9_92 = arith.constant 9 : index
    %c0_93 = arith.constant 0 : index
    %c0_94 = arith.constant 0 : index
    %138 = vector.load %arg7[%c9_92, %c0_93, %c0_94] : memref<12x32x16xf32, #tpu.memory_space<vmem>>, vector<1x32x16xf32>
    %139 = vector.shape_cast %138 : vector<1x32x16xf32> to vector<32x16xf32>
    %cst_95 = arith.constant dense<0.000000e+00> : vector<6x16xf32>
    %140 = tpu.matmul %137, %139, %cst_95 {dimension_numbers = #tpu.dot_dimension_numbers<[1], [0], [0], [1], [0, 0, 1, 1], [], []>} : vector<6x32xf32>, vector<32x16xf32>, vector<6x16xf32> -> vector<6x16xf32>
    %141 = arith.addf %135, %140 : vector<6x16xf32>
    %c0_96 = arith.constant 0 : index
    %c10 = arith.constant 10 : index
    %c0_97 = arith.constant 0 : index
    %142 = vector.load %arg10[%c0_96, %c10, %c0_97] : memref<6x12x32xf32, #tpu.memory_space<vmem>>, vector<6x1x32xf32>
    %143 = vector.shape_cast %142 : vector<6x1x32xf32> to vector<6x32xf32>
    %c10_98 = arith.constant 10 : index
    %c0_99 = arith.constant 0 : index
    %c0_100 = arith.constant 0 : index
    %144 = vector.load %arg7[%c10_98, %c0_99, %c0_100] : memref<12x32x16xf32, #tpu.memory_space<vmem>>, vector<1x32x16xf32>
    %145 = vector.shape_cast %144 : vector<1x32x16xf32> to vector<32x16xf32>
    %cst_101 = arith.constant dense<0.000000e+00> : vector<6x16xf32>
    %146 = tpu.matmul %143, %145, %cst_101 {dimension_numbers = #tpu.dot_dimension_numbers<[1], [0], [0], [1], [0, 0, 1, 1], [], []>} : vector<6x32xf32>, vector<32x16xf32>, vector<6x16xf32> -> vector<6x16xf32>
    %147 = arith.addf %141, %146 : vector<6x16xf32>
    %c0_102 = arith.constant 0 : index
    %c11 = arith.constant 11 : index
    %c0_103 = arith.constant 0 : index
    %148 = vector.load %arg10[%c0_102, %c11, %c0_103] : memref<6x12x32xf32, #tpu.memory_space<vmem>>, vector<6x1x32xf32>
    %149 = vector.shape_cast %148 : vector<6x1x32xf32> to vector<6x32xf32>
    %c11_104 = arith.constant 11 : index
    %c0_105 = arith.constant 0 : index
    %c0_106 = arith.constant 0 : index
    %150 = vector.load %arg7[%c11_104, %c0_105, %c0_106] : memref<12x32x16xf32, #tpu.memory_space<vmem>>, vector<1x32x16xf32>
    %151 = vector.shape_cast %150 : vector<1x32x16xf32> to vector<32x16xf32>
    %cst_107 = arith.constant dense<0.000000e+00> : vector<6x16xf32>
    %152 = tpu.matmul %149, %151, %cst_107 {dimension_numbers = #tpu.dot_dimension_numbers<[1], [0], [0], [1], [0, 0, 1, 1], [], []>} : vector<6x32xf32>, vector<32x16xf32>, vector<6x16xf32> -> vector<6x16xf32>
    %153 = arith.addf %147, %152 : vector<6x16xf32>
    %c0_108 = arith.constant 0 : index
    %c0_109 = arith.constant 0 : index
    %154 = vector.load %arg8[%c0_108, %c0_109] : memref<1x16xf32, #tpu.memory_space<vmem>>, vector<1x16xf32>
    %155 = vector.broadcast %154 : vector<1x16xf32> to vector<6x16xf32>
    %156 = arith.addf %153, %155 : vector<6x16xf32>
    %c0_110 = arith.constant 0 : index
    %c0_111 = arith.constant 0 : index
    %157 = vector.load %arg9[%c0_110, %c0_111] : memref<6x16xf32, #tpu.memory_space<vmem>>, vector<6x16xf32>
    tpu.vector_store %arg9[%c0_110, %c0_111], %156 {strides = array<i32>} : memref<6x16xf32, #tpu.memory_space<vmem>>, vector<6x16xf32>,
    return
  }
}

</mosaic_0001>

<llo_original>
// kernel: prediction_head_forward.1
$region0: #{prediction_head_forward.1}
  #allocation0 [shape = 'u32[]', space=smem, size = 0x4, offset = 0x4, fixed_abs, tag = 'smem constant byte address 0x4 - core index']
  #allocation1 [shape = 'u32[144,128]{1,0:T(1,128)}', space=vmem, size = 0x12000, scoped, tag = 'internal scratch']
  #allocation2 [shape = 'f32[6,12,32]{2,1,0:T(8,128)}', space=vmem, size = 0xc000, scoped, tag = 'scratch operand']
  %s0 = inlined_call_operand.vmem [shape: f32[6,12,32], index: 0, kind: input, shape index: {}]
  %s1 = inlined_call_operand.vmem [shape: f32[4,32,8], index: 1, kind: input, shape index: {}]
  %s2 = inlined_call_operand.vmem [shape: f32[4,32,8], index: 2, kind: input, shape index: {}]
  %s3 = inlined_call_operand.vmem [shape: f32[4,32,8], index: 3, kind: input, shape index: {}]
  %s4 = inlined_call_operand.vmem [shape: f32[4,8,32], index: 4, kind: input, shape index: {}]
  %s5 = inlined_call_operand.vmem [shape: f32[1,1,32], index: 5, kind: input, shape index: {}]
  %s6 = inlined_call_operand.vmem [shape: f32[1,1,32], index: 6, kind: input, shape index: {}]
  %s7 = inlined_call_operand.vmem [shape: f32[12,32,16], index: 7, kind: input, shape index: {}]
  %s8 = inlined_call_operand.vmem [shape: f32[1,16], index: 8, kind: input, shape index: {}]
  %s9 = inlined_call_operand.vmem [shape: f32[6,16], index: 9, kind: output, shape index: {}]
  %s10 = sld [smem:[#allocation0]]
  $region46: #{prediction_head_forward.1} parent=0
    _
  %s12 = ssub.s32 1, %s10
  %s13 = scalar_select 0, %s12, %s10
  // Predicated region
  $region2: #{prediction_head_forward.1} parent=0 // pred_check
    _
  $region3: #{prediction_head_forward.1} parent=0 // pred_check_branch
    %15 = sbr.rel (0) target = $region5
  $region4: #{prediction_head_forward.1} parent=0 // pred_region
    _
  $region5: #{prediction_head_forward.1} parent=0 // pred_fallthru
    _
  // Predicated region
  $region6: #{prediction_head_forward.1} parent=0 // pred_check
    _
  $region7: #{prediction_head_forward.1} parent=0 // pred_check_branch
    %17 = sbr.rel (0) target = $region9
  $region8: #{prediction_head_forward.1} parent=0 // pred_region
    _
  $region9: #{prediction_head_forward.1} parent=0 // pred_fallthru
    _
  // Predicated region
  $region10: #{prediction_head_forward.1} parent=0 // pred_check
    _
  $region11: #{prediction_head_forward.1} parent=0 // pred_check_branch
    %19 = sbr.rel (0) target = $region13
  $region12: #{prediction_head_forward.1} parent=0 // pred_region
    _
  $region13: #{prediction_head_forward.1} parent=0 // pred_fallthru
    _
  // Predicated region
  $region14: #{prediction_head_forward.1} parent=0 // pred_check
    _
  $region15: #{prediction_head_forward.1} parent=0 // pred_check_branch
    %21 = sbr.rel (0) target = $region17
  $region16: #{prediction_head_forward.1} parent=0 // pred_region
    _
  $region17: #{prediction_head_forward.1} parent=0 // pred_fallthru
    _
  // Predicated region
  $region18: #{prediction_head_forward.1} parent=0 // pred_check
    _
  $region19: #{prediction_head_forward.1} parent=0 // pred_check_branch
    %23 = sbr.rel (0) target = $region21
  $region20: #{prediction_head_forward.1} parent=0 // pred_region
    _
  $region21: #{prediction_head_forward.1} parent=0 // pred_fallthru
    _
  // Predicated region
  $region22: #{prediction_head_forward.1} parent=0 // pred_check
    _
  $region23: #{prediction_head_forward.1} parent=0 // pred_check_branch
    %25 = sbr.rel (0) target = $region25
  $region24: #{prediction_head_forward.1} parent=0 // pred_region
    _
  $region25: #{prediction_head_forward.1} parent=0 // pred_fallthru
    _
  // Predicated region
  $region26: #{prediction_head_forward.1} parent=0 // pred_check
    _
  $region27: #{prediction_head_forward.1} parent=0 // pred_check_branch
    %27 = sbr.rel (0) target = $region29
  $region28: #{prediction_head_forward.1} parent=0 // pred_region
    _
  $region29: #{prediction_head_forward.1} parent=0 // pred_fallthru
    _
  // Predicated region
  $region30: #{prediction_head_forward.1} parent=0 // pred_check
    _
  $region31: #{prediction_head_forward.1} parent=0 // pred_check_branch
    %29 = sbr.rel (0) target = $region33
  $region32: #{prediction_head_forward.1} parent=0 // pred_region
    _
  $region33: #{prediction_head_forward.1} parent=0 // pred_fallthru
    _
  // Predicated region
  $region34: #{prediction_head_forward.1} parent=0 // pred_check
    _
  $region35: #{prediction_head_forward.1} parent=0 // pred_check_branch
    %31 = sbr.rel (0) target = $region37
  $region36: #{prediction_head_forward.1} parent=0 // pred_region
    _
  $region37: #{prediction_head_forward.1} parent=0 // pred_fallthru
    _
  %v32 = vld [vmem:[%s0] sm:$0xff]
  %v33 = vld [vmem:[%s0 + $0x8] sm:$0xf]
  %v34 = vld [vmem:[%s0 + $0x10] sm:$0xff]
  %v35 = vld [vmem:[%s0 + $0x18] sm:$0xf]
  %v36 = vld [vmem:[%s0 + $0x20] sm:$0xff]
  %v37 = vld [vmem:[%s0 + $0x28] sm:$0xf]
  %v38 = vld [vmem:[%s0 + $0x30] sm:$0xff]
  %v39 = vld [vmem:[%s0 + $0x38] sm:$0xf]
  %v40 = vld [vmem:[%s0 + $0x40] sm:$0xff]
  %v41 = vld [vmem:[%s0 + $0x48] sm:$0xf]
  %v42 = vld [vmem:[%s0 + $0x50] sm:$0xff]
  %v43 = vld [vmem:[%s0 + $0x58] sm:$0xf]
  %v44 = vld [vmem:[%s1] sm:$0xff]
  %v45 = vld [vmem:[%s1 + $0x8] sm:$0xff]
  %v46 = vld [vmem:[%s1 + $0x10] sm:$0xff]
  %v47 = vld [vmem:[%s1 + $0x18] sm:$0xff]
  %v48 = vld [vmem:[%s1 + $0x20] sm:$0xff]
  %v49 = vld [vmem:[%s1 + $0x28] sm:$0xff]
  %v50 = vld [vmem:[%s1 + $0x30] sm:$0xff]
  %v51 = vld [vmem:[%s1 + $0x38] sm:$0xff]
  %v52 = vld [vmem:[%s1 + $0x40] sm:$0xff]
  %v53 = vld [vmem:[%s1 + $0x48] sm:$0xff]
  %v54 = vld [vmem:[%s1 + $0x50] sm:$0xff]
  %v55 = vld [vmem:[%s1 + $0x58] sm:$0xff]
  %v56 = vld [vmem:[%s1 + $0x60] sm:$0xff]
  %v57 = vld [vmem:[%s1 + $0x68] sm:$0xff]
  %v58 = vld [vmem:[%s1 + $0x70] sm:$0xff]
  %v59 = vld [vmem:[%s1 + $0x78] sm:$0xff]
  %v60 = vld [vmem:[%s2] sm:$0xff]
  %v61 = vld [vmem:[%s2 + $0x8] sm:$0xff]
  %v62 = vld [vmem:[%s2 + $0x10] sm:$0xff]
  %v63 = vld [vmem:[%s2 + $0x18] sm:$0xff]
  %v64 = vld [vmem:[%s2 + $0x20] sm:$0xff]
  %v65 = vld [vmem:[%s2 + $0x28] sm:$0xff]
  %v66 = vld [vmem:[%s2 + $0x30] sm:$0xff]
  %v67 = vld [vmem:[%s2 + $0x38] sm:$0xff]
  %v68 = vld [vmem:[%s2 + $0x40] sm:$0xff]
  %v69 = vld [vmem:[%s2 + $0x48] sm:$0xff]
  %v70 = vld [vmem:[%s2 + $0x50] sm:$0xff]
  %v71 = vld [vmem:[%s2 + $0x58] sm:$0xff]
  %v72 = vld [vmem:[%s2 + $0x60] sm:$0xff]
  %v73 = vld [vmem:[%s2 + $0x68] sm:$0xff]
  %v74 = vld [vmem:[%s2 + $0x70] sm:$0xff]
  %v75 = vld [vmem:[%s2 + $0x78] sm:$0xff]
  %v76 = vld [vmem:[%s3] sm:$0xff]
  %v77 = vld [vmem:[%s3 + $0x8] sm:$0xff]
  %v78 = vld [vmem:[%s3 + $0x10] sm:$0xff]
  %v79 = vld [vmem:[%s3 + $0x18] sm:$0xff]
  %v80 = vld [vmem:[%s3 + $0x20] sm:$0xff]
  %v81 = vld [vmem:[%s3 + $0x28] sm:$0xff]
  %v82 = vld [vmem:[%s3 + $0x30] sm:$0xff]
  %v83 = vld [vmem:[%s3 + $0x38] sm:$0xff]
  %v84 = vld [vmem:[%s3 + $0x40] sm:$0xff]
  %v85 = vld [vmem:[%s3 + $0x48] sm:$0xff]
  %v86 = vld [vmem:[%s3 + $0x50] sm:$0xff]
  %v87 = vld [vmem:[%s3 + $0x58] sm:$0xff]
  %v88 = vld [vmem:[%s3 + $0x60] sm:$0xff]
  %v89 = vld [vmem:[%s3 + $0x68] sm:$0xff]
  %v90 = vld [vmem:[%s3 + $0x70] sm:$0xff]
  %v91 = vld [vmem:[%s3 + $0x78] sm:$0xff]
  %v92 = vld [vmem:[%s4] sm:$0xff]
  %v93 = vld [vmem:[%s4 + $0x8] sm:$0xff]
  %v94 = vld [vmem:[%s4 + $0x10] sm:$0xff]
  %v95 = vld [vmem:[%s4 + $0x18] sm:$0xff]
  %vm96 = vcmask 261120
  %v98 = vsel %vm96, %v32, 0
  %v101 = vsel %vm96, %v33, 0
  %103 = vmatprep.subr.mxu0 0.0
  %104 = vmatpush1.msra.mxu0 %v44
  %105 = vmatprep.subr.mxu0 0.0
  %106 = vmatpush1.msra.mxu0 %v45
  %107 = vmatprep.subr.mxu0 0.0
  %108 = vmatpush1.msra.mxu0 %v46
  %109 = vmatprep.subr.mxu0 0.0
  %110 = vmatpush1.msra.mxu0 %v47
  %111 = vmatprep.subr.mxu0 0.0
  %112 = vmatpush1.msra.mxu0 0.0
  %113 = vmatprep.subr.mxu0 0.0
  %114 = vmatpush1.msra.mxu0 0.0
  %115 = vmatprep.subr.mxu0 0.0
  %116 = vmatpush1.msra.mxu0 0.0
  %117 = vmatprep.subr.mxu0 0.0
  %118 = vmatpush1.msra.mxu0 0.0
  %119 = vmatprep.subr.mxu0 0.0
  %120 = vmatpush1.msra.mxu0 0.0
  %121 = vmatprep.subr.mxu0 0.0
  %122 = vmatpush1.msra.mxu0 0.0
  %123 = vmatprep.subr.mxu0 0.0
  %124 = vmatpush1.msra.mxu0 0.0
  %125 = vmatprep.subr.mxu0 0.0
  %126 = vmatpush1.msra.mxu0 0.0
  %127 = vmatprep.subr.mxu0 0.0
  %128 = vmatpush1.msra.mxu0 0.0
  %129 = vmatprep.subr.mxu0 0.0
  %130 = vmatpush1.msra.mxu0 0.0
  %131 = vmatprep.subr.mxu0 0.0
  %132 = vmatpush1.msra.mxu0 0.0
  %133 = vmatprep.subr.mxu0 0.0
  %134 = vmatpush1.msra.mxu0 0.0
  %135 = vmatprep.subr.mxu0 0.0
  %136 = vmatpush1.msra.mxu0 0.0
  %137 = vmatprep.subr.mxu0 0.0
  %138 = vmatpush1.msra.mxu0 0.0
  %139 = vmatprep.subr.mxu0 0.0
  %140 = vmatpush1.msra.mxu0 0.0
  %141 = vmatprep.subr.mxu0 0.0
  %142 = vmatpush1.msra.mxu0 0.0
  %143 = vmatprep.subr.mxu0 0.0
  %144 = vmatpush1.msra.mxu0 0.0
  %145 = vmatprep.subr.mxu0 0.0
  %146 = vmatpush1.msra.mxu0 0.0
  %147 = vmatprep.subr.mxu0 0.0
  %148 = vmatpush1.msra.mxu0 0.0
  %149 = vmatprep.subr.mxu0 0.0
  %150 = vmatpush1.msra.mxu0 0.0
  %151 = vmatprep.subr.mxu0 0.0
  %152 = vmatpush1.msra.mxu0 0.0
  %153 = vmatprep.subr.mxu0 0.0
  %154 = vmatpush1.msra.mxu0 0.0
  %155 = vmatprep.subr.mxu0 0.0
  %156 = vmatpush1.msra.mxu0 0.0
  %157 = vmatprep.subr.mxu0 0.0
  %158 = vmatpush1.msra.mxu0 0.0
  %159 = vmatprep.subr.mxu0 0.0
  %160 = vmatpush1.msra.mxu0 0.0
  %161 = vmatprep.subr.mxu0 0.0
  %162 = vmatpush1.msra.mxu0 0.0
  %163 = vmatprep.subr.mxu0 0.0
  %164 = vmatpush1.msra.mxu0 0.0
  %165 = vmatprep.subr.mxu0 0.0
  %166 = vmatpush1.msra.mxu0 0.0
  %167 = vmatprep.mubr.f32.mxu0 0.0
  %168 = vmatmul.mubr.f32.gmra.mrb[0].mxu0 %v98
  %v169 = vpop.f32.mrb[0].mxu0
  %v170 = vadd.f32 0.0, %v169
  %v171 = vpop.f32.mrb[0].mxu0
  %172 = vmatprep.mubr.f32.mxu0 0.0
  %173 = vmatmul.mubr.f32.gmra.mrb[0].mxu0 %v101
  %v174 = vpop.f32.mrb[0].mxu0
  %v175 = vadd.f32 0.0, %v174
  %v176 = vpop.f32.mrb[0].mxu0
  %177 = vdwg.mxu0
  %v179 = vsel %vm96, %v34, 0
  %v182 = vsel %vm96, %v35, 0
  %184 = vmatprep.subr.mxu0 0.0
  %185 = vmatpush1.msra.mxu0 %v44
  %186 = vmatprep.subr.mxu0 0.0
  %187 = vmatpush1.msra.mxu0 %v45
  %188 = vmatprep.subr.mxu0 0.0
  %189 = vmatpush1.msra.mxu0 %v46
  %190 = vmatprep.subr.mxu0 0.0
  %191 = vmatpush1.msra.mxu0 %v47
  %192 = vmatprep.subr.mxu0 0.0
  %193 = vmatpush1.msra.mxu0 0.0
  %194 = vmatprep.subr.mxu0 0.0
  %195 = vmatpush1.msra.mxu0 0.0
  %196 = vmatprep.subr.mxu0 0.0
  %197 = vmatpush1.msra.mxu0 0.0
  %198 = vmatprep.subr.mxu0 0.0
  %199 = vmatpush1.msra.mxu0 0.0
  %200 = vmatprep.subr.mxu0 0.0
  %201 = vmatpush1.msra.mxu0 0.0
  %202 = vmatprep.subr.mxu0 0.0
  %203 = vmatpush1.msra.mxu0 0.0
  %204 = vmatprep.subr.mxu0 0.0
  %205 = vmatpush1.msra.mxu0 0.0
  %206 = vmatprep.subr.mxu0 0.0
  %207 = vmatpush1.msra.mxu0 0.0
  %208 = vmatprep.subr.mxu0 0.0
  %209 = vmatpush1.msra.mxu0 0.0
  %210 = vmatprep.subr.mxu0 0.0
  %211 = vmatpush1.msra.mxu0 0.0
  %212 = vmatprep.subr.mxu0 0.0
  %213 = vmatpush1.msra.mxu0 0.0
  %214 = vmatprep.subr.mxu0 0.0
  %215 = vmatpush1.msra.mxu0 0.0
  %216 = vmatprep.subr.mxu0 0.0
  %217 = vmatpush1.msra.mxu0 0.0
  %218 = vmatprep.subr.mxu0 0.0
  %219 = vmatpush1.msra.mxu0 0.0
  %220 = vmatprep.subr.mxu0 0.0
  %221 = vmatpush1.msra.mxu0 0.0
  %222 = vmatprep.subr.mxu0 0.0
  %223 = vmatpush1.msra.mxu0 0.0
  %224 = vmatprep.subr.mxu0 0.0
  %225 = vmatpush1.msra.mxu0 0.0
  %226 = vmatprep.subr.mxu0 0.0
  %227 = vmatpush1.msra.mxu0 0.0
  %228 = vmatprep.subr.mxu0 0.0
  %229 = vmatpush1.msra.mxu0 0.0
  %230 = vmatprep.subr.mxu0 0.0
  %231 = vmatpush1.msra.mxu0 0.0
  %232 = vmatprep.subr.mxu0 0.0
  %233 = vmatpush1.msra.mxu0 0.0
  %234 = vmatprep.subr.mxu0 0.0
  %235 = vmatpush1.msra.mxu0 0.0
  %236 = vmatprep.subr.mxu0 0.0
  %237 = vmatpush1.msra.mxu0 0.0
  %238 = vmatprep.subr.mxu0 0.0
  %239 = vmatpush1.msra.mxu0 0.0
  %240 = vmatprep.subr.mxu0 0.0
  %241 = vmatpush1.msra.mxu0 0.0
  %242 = vmatprep.subr.mxu0 0.0
  %243 = vmatpush1.msra.mxu0 0.0
  %244 = vmatprep.subr.mxu0 0.0
  %245 = vmatpush1.msra.mxu0 0.0
  %246 = vmatprep.subr.mxu0 0.0
  %247 = vmatpush1.msra.mxu0 0.0
  %248 = vmatprep.mubr.f32.mxu0 0.0
  %249 = vmatmul.mubr.f32.gmra.mrb[0].mxu0 %v179
  %v250 = vpop.f32.mrb[0].mxu0
  %v251 = vadd.f32 0.0, %v250
  %v252 = vpop.f32.mrb[0].mxu0
  %253 = vmatprep.mubr.f32.mxu0 0.0
  %254 = vmatmul.mubr.f32.gmra.mrb[0].mxu0 %v182
  %v255 = vpop.f32.mrb[0].mxu0
  %v256 = vadd.f32 0.0, %v255
  %v257 = vpop.f32.mrb[0].mxu0
  %258 = vdwg.mxu0
  %v260 = vsel %vm96, %v36, 0
  %v263 = vsel %vm96, %v37, 0
  %265 = vmatprep.subr.mxu0 0.0
  %266 = vmatpush1.msra.mxu0 %v44
  %267 = vmatprep.subr.mxu0 0.0
  %268 = vmatpush1.msra.mxu0 %v45
  %269 = vmatprep.subr.mxu0 0.0
  %270 = vmatpush1.msra.mxu0 %v46
  %271 = vmatprep.subr.mxu0 0.0
  %272 = vmatpush1.msra.mxu0 %v47
  %273 = vmatprep.subr.mxu0 0.0
  %274 = vmatpush1.msra.mxu0 0.0
  %275 = vmatprep.subr.mxu0 0.0
  %276 = vmatpush1.msra.mxu0 0.0
  %277 = vmatprep.subr.mxu0 0.0
  %278 = vmatpush1.msra.mxu0 0.0
  %279 = vmatprep.subr.mxu0 0.0
  %280 = vmatpush1.msra.mxu0 0.0
  %281 = vmatprep.subr.mxu0 0.0
  %282 = vmatpush1.msra.mxu0 0.0
  %283 = vmatprep.subr.mxu0 0.0
  %284 = vmatpush1.msra.mxu0 0.0
  %285 = vmatprep.subr.mxu0 0.0
  %286 = vmatpush1.msra.mxu0 0.0
  %287 = vmatprep.subr.mxu0 0.0
  %288 = vmatpush1.msra.mxu0 0.0
  %289 = vmatprep.subr.mxu0 0.0
  %290 = vmatpush1.msra.mxu0 0.0
  %291 = vmatprep.subr.mxu0 0.0
  %292 = vmatpush1.msra.mxu0 0.0
  %293 = vmatprep.subr.mxu0 0.0
  %294 = vmatpush1.msra.mxu0 0.0
  %295 = vmatprep.subr.mxu0 0.0
  %296 = vmatpush1.msra.mxu0 0.0
  %297 = vmatprep.subr.mxu0 0.0
  %298 = vmatpush1.msra.mxu0 0.0
  %299 = vmatprep.subr.mxu0 0.0
  %300 = vmatpush1.msra.mxu0 0.0
  %301 = vmatprep.subr.mxu0 0.0
  %302 = vmatpush1.msra.mxu0 0.0
  %303 = vmatprep.subr.mxu0 0.0
  %304 = vmatpush1.msra.mxu0 0.0
  %305 = vmatprep.subr.mxu0 0.0
  %306 = vmatpush1.msra.mxu0 0.0
  %307 = vmatprep.subr.mxu0 0.0
  %308 = vmatpush1.msra.mxu0 0.0
  %309 = vmatprep.subr.mxu0 0.0
  %310 = vmatpush1.msra.mxu0 0.0
  %311 = vmatprep.subr.mxu0 0.0
  %312 = vmatpush1.msra.mxu0 0.0
  %313 = vmatprep.subr.mxu0 0.0
  %314 = vmatpush1.msra.mxu0 0.0
  %315 = vmatprep.subr.mxu0 0.0
  %316 = vmatpush1.msra.mxu0 0.0
  %317 = vmatprep.subr.mxu0 0.0
  %318 = vmatpush1.msra.mxu0 0.0
  %319 = vmatprep.subr.mxu0 0.0
  %320 = vmatpush1.msra.mxu0 0.0
  %321 = vmatprep.subr.mxu0 0.0
  %322 = vmatpush1.msra.mxu0 0.0
  %323 = vmatprep.subr.mxu0 0.0
  %324 = vmatpush1.msra.mxu0 0.0
  %325 = vmatprep.subr.mxu0 0.0
  %326 = vmatpush1.msra.mxu0 0.0
  %327 = vmatprep.subr.mxu0 0.0
  %328 = vmatpush1.msra.mxu0 0.0
  %329 = vmatprep.mubr.f32.mxu0 0.0
  %330 = vmatmul.mubr.f32.gmra.mrb[0].mxu0 %v260
  %v331 = vpop.f32.mrb[0].mxu0
  %v332 = vadd.f32 0.0, %v331
  %v333 = vpop.f32.mrb[0].mxu0
  %334 = vmatprep.mubr.f32.mxu0 0.0
  %335 = vmatmul.mubr.f32.gmra.mrb[0].mxu0 %v263
  %v336 = vpop.f32.mrb[0].mxu0
  %v337 = vadd.f32 0.0, %v336
  %v338 = vpop.f32.mrb[0].mxu0
  %339 = vdwg.mxu0
  %v341 = vsel %vm96, %v38, 0
  %v344 = vsel %vm96, %v39, 0
  %346 = vmatprep.subr.mxu0 0.0
  %347 = vmatpush1.msra.mxu0 %v44
  %348 = vmatprep.subr.mxu0 0.0
  %349 = vmatpush1.msra.mxu0 %v45
  %350 = vmatprep.subr.mxu0 0.0
  %351 = vmatpush1.msra.mxu0 %v46
  %352 = vmatprep.subr.mxu0 0.0
  %353 = vmatpush1.msra.mxu0 %v47
  %354 = vmatprep.subr.mxu0 0.0
  %355 = vmatpush1.msra.mxu0 0.0
  %356 = vmatprep.subr.mxu0 0.0
  %357 = vmatpush1.msra.mxu0 0.0
  %358 = vmatprep.subr.mxu0 0.0
  %359 = vmatpush1.msra.mxu0 0.0
  %360 = vmatprep.subr.mxu0 0.0
  %361 = vmatpush1.msra.mxu0 0.0
  %362 = vmatprep.subr.mxu0 0.0
  %363 = vmatpush1.msra.mxu0 0.0
  %364 = vmatprep.subr.mxu0 0.0
  %365 = vmatpush1.msra.mxu0 0.0
  %366 = vmatprep.subr.mxu0 0.0
  %367 = vmatpush1.msra.mxu0 0.0
  %368 = vmatprep.subr.mxu0 0.0
  %369 = vmatpush1.msra.mxu0 0.0
  %370 = vmatprep.subr.mxu0 0.0
  %371 = vmatpush1.msra.mxu0 0.0
  %372 = vmatprep.subr.mxu0 0.0
  %373 = vmatpush1.msra.mxu0 0.0
  %374 = vmatprep.subr.mxu0 0.0
  %375 = vmatpush1.msra.mxu0 0.0
  %376 = vmatprep.subr.mxu0 0.0
  %377 = vmatpush1.msra.mxu0 0.0
  %378 = vmatprep.subr.mxu0 0.0
  %379 = vmatpush1.msra.mxu0 0.0
  %380 = vmatprep.subr.mxu0 0.0
  %381 = vmatpush1.msra.mxu0 0.0
  %382 = vmatprep.subr.mxu0 0.0
  %383 = vmatpush1.msra.mxu0 0.0
  %384 = vmatprep.subr.mxu0 0.0
  %385 = vmatpush1.msra.mxu0 0.0
  %386 = vmatprep.subr.mxu0 0.0
  %387 = vmatpush1.msra.mxu0 0.0
  %388 = vmatprep.subr.mxu0 0.0
  %389 = vmatpush1.msra.mxu0 0.0
  %390 = vmatprep.subr.mxu0 0.0
  %391 = vmatpush1.msra.mxu0 0.0
  %392 = vmatprep.subr.mxu0 0.0
  %393 = vmatpush1.msra.mxu0 0.0
  %394 = vmatprep.subr.mxu0 0.0
  %395 = vmatpush1.msra.mxu0 0.0
  %396 = vmatprep.subr.mxu0 0.0
  %397 = vmatpush1.msra.mxu0 0.0
  %398 = vmatprep.subr.mxu0 0.0
  %399 = vmatpush1.msra.mxu0 0.0
  %400 = vmatprep.subr.mxu0 0.0
  %401 = vmatpush1.msra.mxu0 0.0
  %402 = vmatprep.subr.mxu0 0.0
  %403 = vmatpush1.msra.mxu0 0.0
  %404 = vmatprep.subr.mxu0 0.0
  %405 = vmatpush1.msra.mxu0 0.0
  %406 = vmatprep.subr.mxu0 0.0
  %407 = vmatpush1.msra.mxu0 0.0
  %408 = vmatprep.subr.mxu0 0.0
  %409 = vmatpush1.msra.mxu0 0.0
  %410 = vmatprep.mubr.f32.mxu0 0.0
  %411 = vmatmul.mubr.f32.gmra.mrb[0].mxu0 %v341
  %v412 = vpop.f32.mrb[0].mxu0
  %v413 = vadd.f32 0.0, %v412
  %v414 = vpop.f32.mrb[0].mxu0
  %415 = vmatprep.mubr.f32.mxu0 0.0
  %416 = vmatmul.mubr.f32.gmra.mrb[0].mxu0 %v344
  %v417 = vpop.f32.mrb[0].mxu0
  %v418 = vadd.f32 0.0, %v417
  %v419 = vpop.f32.mrb[0].mxu0
  %420 = vdwg.mxu0
  %v422 = vsel %vm96, %v40, 0
  %v425 = vsel %vm96, %v41, 0
  %427 = vmatprep.subr.mxu0 0.0
  %428 = vmatpush1.msra.mxu0 %v44
  %429 = vmatprep.subr.mxu0 0.0
  %430 = vmatpush1.msra.mxu0 %v45
  %431 = vmatprep.subr.mxu0 0.0
  %432 = vmatpush1.msra.mxu0 %v46
  %433 = vmatprep.subr.mxu0 0.0
  %434 = vmatpush1.msra.mxu0 %v47
  %435 = vmatprep.subr.mxu0 0.0
  %436 = vmatpush1.msra.mxu0 0.0
  %437 = vmatprep.subr.mxu0 0.0
  %438 = vmatpush1.msra.mxu0 0.0
  %439 = vmatprep.subr.mxu0 0.0
  %440 = vmatpush1.msra.mxu0 0.0
  %441 = vmatprep.subr.mxu0 0.0
  %442 = vmatpush1.msra.mxu0 0.0
  %443 = vmatprep.subr.mxu0 0.0
  %444 = vmatpush1.msra.mxu0 0.0
  %445 = vmatprep.subr.mxu0 0.0
  %446 = vmatpush1.msra.mxu0 0.0
  %447 = vmatprep.subr.mxu0 0.0
  %448 = vmatpush1.msra.mxu0 0.0
  %449 = vmatprep.subr.mxu0 0.0
  %450 = vmatpush1.msra.mxu0 0.0
  %451 = vmatprep.subr.mxu0 0.0
  %452 = vmatpush1.msra.mxu0 0.0
  %453 = vmatprep.subr.mxu0 0.0
  %454 = vmatpush1.msra.mxu0 0.0
  %455 = vmatprep.subr.mxu0 0.0
  %456 = vmatpush1.msra.mxu0 0.0
  %457 = vmatprep.subr.mxu0 0.0
  %458 = vmatpush1.msra.mxu0 0.0
  %459 = vmatprep.subr.mxu0 0.0
  %460 = vmatpush1.msra.mxu0 0.0
  %461 = vmatprep.subr.mxu0 0.0
  %462 = vmatpush1.msra.mxu0 0.0
  %463 = vmatprep.subr.mxu0 0.0
  %464 = vmatpush1.msra.mxu0 0.0
  %465 = vmatprep.subr.mxu0 0.0
  %466 = vmatpush1.msra.mxu0 0.0
  %467 = vmatprep.subr.mxu0 0.0
  %468 = vmatpush1.msra.mxu0 0.0
  %469 = vmatprep.subr.mxu0 0.0
  %470 = vmatpush1.msra.mxu0 0.0
  %471 = vmatprep.subr.mxu0 0.0
  %472 = vmatpush1.msra.mxu0 0.0
  %473 = vmatprep.subr.mxu0 0.0
  %474 = vmatpush1.msra.mxu0 0.0
  %475 = vmatprep.subr.mxu0 0.0
  %476 = vmatpush1.msra.mxu0 0.0
  %477 = vmatprep.subr.mxu0 0.0
  %478 = vmatpush1.msra.mxu0 0.0
  %479 = vmatprep.subr.mxu0 0.0
  %480 = vmatpush1.msra.mxu0 0.0
  %481 = vmatprep.subr.mxu0 0.0
  %482 = vmatpush1.msra.mxu0 0.0
  %483 = vmatprep.subr.mxu0 0.0
  %484 = vmatpush1.msra.mxu0 0.0
  %485 = vmatprep.subr.mxu0 0.0
  %486 = vmatpush1.msra.mxu0 0.0
  %487 = vmatprep.subr.mxu0 0.0
  %488 = vmatpush1.msra.mxu0 0.0
  %489 = vmatprep.subr.mxu0 0.0
  %490 = vmatpush1.msra.mxu0 0.0
  %491 = vmatprep.mubr.f32.mxu0 0.0
  %492 = vmatmul.mubr.f32.gmra.mrb[0].mxu0 %v422
  %v493 = vpop.f32.mrb[0].mxu0
  %v494 = vadd.f32 0.0, %v493
  %v495 = vpop.f32.mrb[0].mxu0
  %496 = vmatprep.mubr.f32.mxu0 0.0
  %497 = vmatmul.mubr.f32.gmra.mrb[0].mxu0 %v425
  %v498 = vpop.f32.mrb[0].mxu0
  %v499 = vadd.f32 0.0, %v498
  %v500 = vpop.f32.mrb[0].mxu0
  %501 = vdwg.mxu0
  %v503 = vsel %vm96, %v42, 0
  %v506 = vsel %vm96, %v43, 0
  %508 = vmatprep.subr.mxu0 0.0
  %509 = vmatpush1.msra.mxu0 %v44
  %510 = vmatprep.subr.mxu0 0.0
  %511 = vmatpush1.msra.mxu0 %v45
  %512 = vmatprep.subr.mxu0 0.0
  %513 = vmatpush1.msra.mxu0 %v46
  %514 = vmatprep.subr.mxu0 0.0
  %515 = vmatpush1.msra.mxu0 %v47
  %516 = vmatprep.subr.mxu0 0.0
  %517 = vmatpush1.msra.mxu0 0.0
  %518 = vmatprep.subr.mxu0 0.0
  %519 = vmatpush1.msra.mxu0 0.0
  %520 = vmatprep.subr.mxu0 0.0
  %521 = vmatpush1.msra.mxu0 0.0
  %522 = vmatprep.subr.mxu0 0.0
  %523 = vmatpush1.msra.mxu0 0.0
  %524 = vmatprep.subr.mxu0 0.0
  %525 = vmatpush1.msra.mxu0 0.0
  %526 = vmatprep.subr.mxu0 0.0
  %527 = vmatpush1.msra.mxu0 0.0
  %528 = vmatprep.subr.mxu0 0.0
  %529 = vmatpush1.msra.mxu0 0.0
  %530 = vmatprep.subr.mxu0 0.0
  %531 = vmatpush1.msra.mxu0 0.0
  %532 = vmatprep.subr.mxu0 0.0
  %533 = vmatpush1.msra.mxu0 0.0
  %534 = vmatprep.subr.mxu0 0.0
  %535 = vmatpush1.msra.mxu0 0.0
  %536 = vmatprep.subr.mxu0 0.0
  %537 = vmatpush1.msra.mxu0 0.0
  %538 = vmatprep.subr.mxu0 0.0
  %539 = vmatpush1.msra.mxu0 0.0
  %540 = vmatprep.subr.mxu0 0.0
  %541 = vmatpush1.msra.mxu0 0.0
  %542 = vmatprep.subr.mxu0 0.0
  %543 = vmatpush1.msra.mxu0 0.0
  %544 = vmatprep.subr.mxu0 0.0
  %545 = vmatpush1.msra.mxu0 0.0
  %546 = vmatprep.subr.mxu0 0.0
  %547 = vmatpush1.msra.mxu0 0.0
  %548 = vmatprep.subr.mxu0 0.0
  %549 = vmatpush1.msra.mxu0 0.0
  %550 = vmatprep.subr.mxu0 0.0
  %551 = vmatpush1.msra.mxu0 0.0
  %552 = vmatprep.subr.mxu0 0.0
  %553 = vmatpush1.msra.mxu0 0.0
  %554 = vmatprep.subr.mxu0 0.0
  %555 = vmatpush1.msra.mxu0 0.0
  %556 = vmatprep.subr.mxu0 0.0
  %557 = vmatpush1.msra.mxu0 0.0
  %558 = vmatprep.subr.mxu0 0.0
  %559 = vmatpush1.msra.mxu0 0.0
  %560 = vmatprep.subr.mxu0 0.0
  %561 = vmatpush1.msra.mxu0 0.0
  %562 = vmatprep.subr.mxu0 0.0
  %563 = vmatpush1.msra.mxu0 0.0
  %564 = vmatprep.subr.mxu0 0.0
  %565 = vmatpush1.msra.mxu0 0.0
  %566 = vmatprep.subr.mxu0 0.0
  %567 = vmatpush1.msra.mxu0 0.0
  %568 = vmatprep.subr.mxu0 0.0
  %569 = vmatpush1.msra.mxu0 0.0
  %570 = vmatprep.subr.mxu0 0.0
  %571 = vmatpush1.msra.mxu0 0.0
  %572 = vmatprep.mubr.f32.mxu0 0.0
  %573 = vmatmul.mubr.f32.gmra.mrb[0].mxu0 %v503
  %v574 = vpop.f32.mrb[0].mxu0
  %v575 = vadd.f32 0.0, %v574
  %v576 = vpop.f32.mrb[0].mxu0
  %577 = vmatprep.mubr.f32.mxu0 0.0
  %578 = vmatmul.mubr.f32.gmra.mrb[0].mxu0 %v506
  %v579 = vpop.f32.mrb[0].mxu0
  %v580 = vadd.f32 0.0, %v579
  %v581 = vpop.f32.mrb[0].mxu0
  %582 = vdwg.mxu0
  %583 = vmatprep.subr.mxu0 0.0
  %584 = vmatpush1.msra.mxu0 %v48
  %585 = vmatprep.subr.mxu0 0.0
  %586 = vmatpush1.msra.mxu0 %v49
  %587 = vmatprep.subr.mxu0 0.0
  %588 = vmatpush1.msra.mxu0 %v50
  %589 = vmatprep.subr.mxu0 0.0
  %590 = vmatpush1.msra.mxu0 %v51
  %591 = vmatprep.subr.mxu0 0.0
  %592 = vmatpush1.msra.mxu0 0.0
  %593 = vmatprep.subr.mxu0 0.0
  %594 = vmatpush1.msra.mxu0 0.0
  %595 = vmatprep.subr.mxu0 0.0
  %596 = vmatpush1.msra.mxu0 0.0
  %597 = vmatprep.subr.mxu0 0.0
  %598 = vmatpush1.msra.mxu0 0.0
  %599 = vmatprep.subr.mxu0 0.0
  %600 = vmatpush1.msra.mxu0 0.0
  %601 = vmatprep.subr.mxu0 0.0
  %602 = vmatpush1.msra.mxu0 0.0
  %603 = vmatprep.subr.mxu0 0.0
  %604 = vmatpush1.msra.mxu0 0.0
  %605 = vmatprep.subr.mxu0 0.0
  %606 = vmatpush1.msra.mxu0 0.0
  %607 = vmatprep.subr.mxu0 0.0
  %608 = vmatpush1.msra.mxu0 0.0
  %609 = vmatprep.subr.mxu0 0.0
  %610 = vmatpush1.msra.mxu0 0.0
  %611 = vmatprep.subr.mxu0 0.0
  %612 = vmatpush1.msra.mxu0 0.0
  %613 = vmatprep.subr.mxu0 0.0
  %614 = vmatpush1.msra.mxu0 0.0
  %615 = vmatprep.subr.mxu0 0.0
  %616 = vmatpush1.msra.mxu0 0.0
  %617 = vmatprep.subr.mxu0 0.0
  %618 = vmatpush1.msra.mxu0 0.0
  %619 = vmatprep.subr.mxu0 0.0
  %620 = vmatpush1.msra.mxu0 0.0
  %621 = vmatprep.subr.mxu0 0.0
  %622 = vmatpush1.msra.mxu0 0.0
  %623 = vmatprep.subr.mxu0 0.0
  %624 = vmatpush1.msra.mxu0 0.0
  %625 = vmatprep.subr.mxu0 0.0
  %626 = vmatpush1.msra.mxu0 0.0
  %627 = vmatprep.subr.mxu0 0.0
  %628 = vmatpush1.msra.mxu0 0.0
  %629 = vmatprep.subr.mxu0 0.0
  %630 = vmatpush1.msra.mxu0 0.0
  %631 = vmatprep.subr.mxu0 0.0
  %632 = vmatpush1.msra.mxu0 0.0
  %633 = vmatprep.subr.mxu0 0.0
  %634 = vmatpush1.msra.mxu0 0.0
  %635 = vmatprep.subr.mxu0 0.0
  %636 = vmatpush1.msra.mxu0 0.0
  %637 = vmatprep.subr.mxu0 0.0
  %638 = vmatpush1.msra.mxu0 0.0
  %639 = vmatprep.subr.mxu0 0.0
  %640 = vmatpush1.msra.mxu0 0.0
  %641 = vmatprep.subr.mxu0 0.0
  %642 = vmatpush1.msra.mxu0 0.0
  %643 = vmatprep.subr.mxu0 0.0
  %644 = vmatpush1.msra.mxu0 0.0
  %645 = vmatprep.subr.mxu0 0.0
  %646 = vmatpush1.msra.mxu0 0.0
  %647 = vmatprep.mubr.f32.mxu0 0.0
  %648 = vmatmul.mubr.f32.gmra.mrb[0].mxu0 %v98
  %v649 = vpop.f32.mrb[0].mxu0
  %v650 = vadd.f32 0.0, %v649
  %v651 = vpop.f32.mrb[0].mxu0
  %652 = vmatprep.mubr.f32.mxu0 0.0
  %653 = vmatmul.mubr.f32.gmra.mrb[0].mxu0 %v101
  %v654 = vpop.f32.mrb[0].mxu0
  %v655 = vadd.f32 0.0, %v654
  %v656 = vpop.f32.mrb[0].mxu0
  %657 = vdwg.mxu0
  %658 = vmatprep.subr.mxu0 0.0
  %659 = vmatpush1.msra.mxu0 %v48
  %660 = vmatprep.subr.mxu0 0.0
  %661 = vmatpush1.msra.mxu0 %v49
  %662 = vmatprep.subr.mxu0 0.0
  %663 = vmatpush1.msra.mxu0 %v50
  %664 = vmatprep.subr.mxu0 0.0
  %665 = vmatpush1.msra.mxu0 %v51
  %666 = vmatprep.subr.mxu0 0.0
  %667 = vmatpush1.msra.mxu0 0.0
  %668 = vmatprep.subr.mxu0 0.0
  %669 = vmatpush1.msra.mxu0 0.0
  %670 = vmatprep.subr.mxu0 0.0
  %671 = vmatpush1.msra.mxu0 0.0
  %672 = vmatprep.subr.mxu0 0.0
  %673 = vmatpush1.msra.mxu0 0.0
  %674 = vmatprep.subr.mxu0 0.0
  %675 = vmatpush1.msra.mxu0 0.0
  %676 = vmatprep.subr.mxu0 0.0
  %677 = vmatpush1.msra.mxu0 0.0
  %678 = vmatprep.subr.mxu0 0.0
  %679 = vmatpush1.msra.mxu0 0.0
  %680 = vmatprep.subr.mxu0 0.0
  %681 = vmatpush1.msra.mxu0 0.0
  %682 = vmatprep.subr.mxu0 0.0
  %683 = vmatpush1.msra.mxu0 0.0
  %684 = vmatprep.subr.mxu0 0.0
  %685 = vmatpush1.msra.mxu0 0.0
  %686 = vmatprep.subr.mxu0 0.0
  %687 = vmatpush1.msra.mxu0 0.0
  %688 = vmatprep.subr.mxu0 0.0
  %689 = vmatpush1.msra.mxu0 0.0
  %690 = vmatprep.subr.mxu0 0.0
  %691 = vmatpush1.msra.mxu0 0.0
  %692 = vmatprep.subr.mxu0 0.0
  %693 = vmatpush1.msra.mxu0 0.0
  %694 = vmatprep.subr.mxu0 0.0
  %695 = vmatpush1.msra.mxu0 0.0
  %696 = vmatprep.subr.mxu0 0.0
  %697 = vmatpush1.msra.mxu0 0.0
  %698 = vmatprep.subr.mxu0 0.0
  %699 = vmatpush1.msra.mxu0 0.0
  %700 = vmatprep.subr.mxu0 0.0
  %701 = vmatpush1.msra.mxu0 0.0
  %702 = vmatprep.subr.mxu0 0.0
  %703 = vmatpush1.msra.mxu0 0.0
  %704 = vmatprep.subr.mxu0 0.0
  %705 = vmatpush1.msra.mxu0 0.0
  %706 = vmatprep.subr.mxu0 0.0
  %707 = vmatpush1.msra.mxu0 0.0
  %708 = vmatprep.subr.mxu0 0.0
  %709 = vmatpush1.msra.mxu0 0.0
  %710 = vmatprep.subr.mxu0 0.0
  %711 = vmatpush1.msra.mxu0 0.0
  %712 = vmatprep.subr.mxu0 0.0
  %713 = vmatpush1.msra.mxu0 0.0
  %714 = vmatprep.subr.mxu0 0.0
  %715 = vmatpush1.msra.mxu0 0.0
  %716 = vmatprep.subr.mxu0 0.0
  %717 = vmatpush1.msra.mxu0 0.0
  %718 = vmatprep.subr.mxu0 0.0
  %719 = vmatpush1.msra.mxu0 0.0
  %720 = vmatprep.subr.mxu0 0.0
  %721 = vmatpush1.msra.mxu0 0.0
  %722 = vmatprep.mubr.f32.mxu0 0.0
  %723 = vmatmul.mubr.f32.gmra.mrb[0].mxu0 %v179
  %v724 = vpop.f32.mrb[0].mxu0
  %v725 = vadd.f32 0.0, %v724
  %v726 = vpop.f32.mrb[0].mxu0
  %727 = vmatprep.mubr.f32.mxu0 0.0
  %728 = vmatmul.mubr.f32.gmra.mrb[0].mxu0 %v182
  %v729 = vpop.f32.mrb[0].mxu0
  %v730 = vadd.f32 0.0, %v729
  %v731 = vpop.f32.mrb[0].mxu0
  %732 = vdwg.mxu0
  %733 = vmatprep.subr.mxu0 0.0
  %734 = vmatpush1.msra.mxu0 %v48
  %735 = vmatprep.subr.mxu0 0.0
  %736 = vmatpush1.msra.mxu0 %v49
  %737 = vmatprep.subr.mxu0 0.0
  %738 = vmatpush1.msra.mxu0 %v50
  %739 = vmatprep.subr.mxu0 0.0
  %740 = vmatpush1.msra.mxu0 %v51
  %741 = vmatprep.subr.mxu0 0.0
  %742 = vmatpush1.msra.mxu0 0.0
  %743 = vmatprep.subr.mxu0 0.0
  %744 = vmatpush1.msra.mxu0 0.0
  %745 = vmatprep.subr.mxu0 0.0
  %746 = vmatpush1.msra.mxu0 0.0
  %747 = vmatprep.subr.mxu0 0.0
  %748 = vmatpush1.msra.mxu0 0.0
  %749 = vmatprep.subr.mxu0 0.0
  %750 = vmatpush1.msra.mxu0 0.0
  %751 = vmatprep.subr.mxu0 0.0
  %752 = vmatpush1.msra.mxu0 0.0
  %753 = vmatprep.subr.mxu0 0.0
  %754 = vmatpush1.msra.mxu0 0.0
  %755 = vmatprep.subr.mxu0 0.0
  %756 = vmatpush1.msra.mxu0 0.0
  %757 = vmatprep.subr.mxu0 0.0
  %758 = vmatpush1.msra.mxu0 0.0
  %759 = vmatprep.subr.mxu0 0.0
  %760 = vmatpush1.msra.mxu0 0.0
  %761 = vmatprep.subr.mxu0 0.0
  %762 = vmatpush1.msra.mxu0 0.0
  %763 = vmatprep.subr.mxu0 0.0
  %764 = vmatpush1.msra.mxu0 0.0
  %765 = vmatprep.subr.mxu0 0.0
  %766 = vmatpush1.msra.mxu0 0.0
  %767 = vmatprep.subr.mxu0 0.0
  %768 = vmatpush1.msra.mxu0 0.0
  %769 = vmatprep.subr.mxu0 0.0
  %770 = vmatpush1.msra.mxu0 0.0
  %771 = vmatprep.subr.mxu0 0.0
  %772 = vmatpush1.msra.mxu0 0.0
  %773 = vmatprep.subr.mxu0 0.0
  %774 = vmatpush1.msra.mxu0 0.0
  %775 = vmatprep.subr.mxu0 0.0
  %776 = vmatpush1.msra.mxu0 0.0
  %777 = vmatprep.subr.mxu0 0.0
  %778 = vmatpush1.msra.mxu0 0.0
  %779 = vmatprep.subr.mxu0 0.0
  %780 = vmatpush1.msra.mxu0 0.0
  %781 = vmatprep.subr.mxu0 0.0
  %782 = vmatpush1.msra.mxu0 0.0
  %783 = vmatprep.subr.mxu0 0.0
  %784 = vmatpush1.msra.mxu0 0.0
  %785 = vmatprep.subr.mxu0 0.0
  %786 = vmatpush1.msra.mxu0 0.0
  %787 = vmatprep.subr.mxu0 0.0
  %788 = vmatpush1.msra.mxu0 0.0
  %789 = vmatprep.subr.mxu0 0.0
  %790 = vmatpush1.msra.mxu0 0.0
  %791 = vmatprep.subr.mxu0 0.0
  %792 = vmatpush1.msra.mxu0 0.0
  %793 = vmatprep.subr.mxu0 0.0
  %794 = vmatpush1.msra.mxu0 0.0
  %795 = vmatprep.subr.mxu0 0.0
  %796 = vmatpush1.msra.mxu0 0.0
  %797 = vmatprep.mubr.f32.mxu0 0.0
  %798 = vmatmul.mubr.f32.gmra.mrb[0].mxu0 %v260
  %v799 = vpop.f32.mrb[0].mxu0
  %v800 = vadd.f32 0.0, %v799
  %v801 = vpop.f32.mrb[0].mxu0
  %802 = vmatprep.mubr.f32.mxu0 0.0
  %803 = vmatmul.mubr.f32.gmra.mrb[0].mxu0 %v263
  %v804 = vpop.f32.mrb[0].mxu0
  %v805 = vadd.f32 0.0, %v804
  %v806 = vpop.f32.mrb[0].mxu0
  %807 = vdwg.mxu0
  %808 = vmatprep.subr.mxu0 0.0
  %809 = vmatpush1.msra.mxu0 %v48
  %810 = vmatprep.subr.mxu0 0.0
  %811 = vmatpush1.msra.mxu0 %v49
  %812 = vmatprep.subr.mxu0 0.0
  %813 = vmatpush1.msra.mxu0 %v50
  %814 = vmatprep.subr.mxu0 0.0
  %815 = vmatpush1.msra.mxu0 %v51
  %816 = vmatprep.subr.mxu0 0.0
  %817 = vmatpush1.msra.mxu0 0.0
  %818 = vmatprep.subr.mxu0 0.0
  %819 = vmatpush1.msra.mxu0 0.0
  %820 = vmatprep.subr.mxu0 0.0
  %821 = vmatpush1.msra.mxu0 0.0
  %822 = vmatprep.subr.mxu0 0.0
  %823 = vmatpush1.msra.mxu0 0.0
  %824 = vmatprep.subr.mxu0 0.0
  %825 = vmatpush1.msra.mxu0 0.0
  %826 = vmatprep.subr.mxu0 0.0
  %827 = vmatpush1.msra.mxu0 0.0
  %828 = vmatprep.subr.mxu0 0.0
  %829 = vmatpush1.msra.mxu0 0.0
  %830 = vmatprep.subr.mxu0 0.0
  %831 = vmatpush1.msra.mxu0 0.0
  %832 = vmatprep.subr.mxu0 0.0
  %833 = vmatpush1.msra.mxu0 0.0
  %834 = vmatprep.subr.mxu0 0.0
  %835 = vmatpush1.msra.mxu0 0.0
  %836 = vmatprep.subr.mxu0 0.0
  %837 = vmatpush1.msra.mxu0 0.0
  %838 = vmatprep.subr.mxu0 0.0
  %839 = vmatpush1.msra.mxu0 0.0
  %840 = vmatprep.subr.mxu0 0.0
  %841 = vmatpush1.msra.mxu0 0.0
  %842 = vmatprep.subr.mxu0 0.0
  %843 = vmatpush1.msra.mxu0 0.0
  %844 = vmatprep.subr.mxu0 0.0
  %845 = vmatpush1.msra.mxu0 0.0
  %846 = vmatprep.subr.mxu0 0.0
  %847 = vmatpush1.msra.mxu0 0.0
  %848 = vmatprep.subr.mxu0 0.0
  %849 = vmatpush1.msra.mxu0 0.0
  %850 = vmatprep.subr.mxu0 0.0
  %851 = vmatpush1.msra.mxu0 0.0
  %852 = vmatprep.subr.mxu0 0.0
  %853 = vmatpush1.msra.mxu0 0.0
  %854 = vmatprep.subr.mxu0 0.0
  %855 = vmatpush1.msra.mxu0 0.0
  %856 = vmatprep.subr.mxu0 0.0
  %857 = vmatpush1.msra.mxu0 0.0
  %858 = vmatprep.subr.mxu0 0.0
  %859 = vmatpush1.msra.mxu0 0.0
  %860 = vmatprep.subr.mxu0 0.0
  %861 = vmatpush1.msra.mxu0 0.0
  %862 = vmatprep.subr.mxu0 0.0
  %863 = vmatpush1.msra.mxu0 0.0
  %864 = vmatprep.subr.mxu0 0.0
  %865 = vmatpush1.msra.mxu0 0.0
  %866 = vmatprep.subr.mxu0 0.0
  %867 = vmatpush1.msra.mxu0 0.0
  %868 = vmatprep.subr.mxu0 0.0
  %869 = vmatpush1.msra.mxu0 0.0
  %870 = vmatprep.subr.mxu0 0.0
  %871 = vmatpush1.msra.mxu0 0.0
  %872 = vmatprep.mubr.f32.mxu0 0.0
  %873 = vmatmul.mubr.f32.gmra.mrb[0].mxu0 %v341
  %v874 = vpop.f32.mrb[0].mxu0
  %v875 = vadd.f32 0.0, %v874
  %v876 = vpop.f32.mrb[0].mxu0
  %877 = vmatprep.mubr.f32.mxu0 0.0
  %878 = vmatmul.mubr.f32.gmra.mrb[0].mxu0 %v344
  %v879 = vpop.f32.mrb[0].mxu0
  %v880 = vadd.f32 0.0, %v879
  %v881 = vpop.f32.mrb[0].mxu0
  %882 = vdwg.mxu0
  %883 = vmatprep.subr.mxu0 0.0
  %884 = vmatpush1.msra.mxu0 %v48
  %885 = vmatprep.subr.mxu0 0.0
  %886 = vmatpush1.msra.mxu0 %v49
  %887 = vmatprep.subr.mxu0 0.0
  %888 = vmatpush1.msra.mxu0 %v50
  %889 = vmatprep.subr.mxu0 0.0
  %890 = vmatpush1.msra.mxu0 %v51
  %891 = vmatprep.subr.mxu0 0.0
  %892 = vmatpush1.msra.mxu0 0.0
  %893 = vmatprep.subr.mxu0 0.0
  %894 = vmatpush1.msra.mxu0 0.0
  %895 = vmatprep.subr.mxu0 0.0
  %896 = vmatpush1.msra.mxu0 0.0
  %897 = vmatprep.subr.mxu0 0.0
  %898 = vmatpush1.msra.mxu0 0.0
  %899 = vmatprep.subr.mxu0 0.0
  %900 = vmatpush1.msra.mxu0 0.0
  %901 = vmatprep.subr.mxu0 0.0
  %902 = vmatpush1.msra.mxu0 0.0
  %903 = vmatprep.subr.mxu0 0.0
  %904 = vmatpush1.msra.mxu0 0.0
  %905 = vmatprep.subr.mxu0 0.0
  %906 = vmatpush1.msra.mxu0 0.0
  %907 = vmatprep.subr.mxu0 0.0
  %908 = vmatpush1.msra.mxu0 0.0
  %909 = vmatprep.subr.mxu0 0.0
  %910 = vmatpush1.msra.mxu0 0.0
  %911 = vmatprep.subr.mxu0 0.0
  %912 = vmatpush1.msra.mxu0 0.0
  %913 = vmatprep.subr.mxu0 0.0
  %914 = vmatpush1.msra.mxu0 0.0
  %915 = vmatprep.subr.mxu0 0.0
  %916 = vmatpush1.msra.mxu0 0.0
  %917 = vmatprep.subr.mxu0 0.0
  %918 = vmatpush1.msra.mxu0 0.0
  %919 = vmatprep.subr.mxu0 0.0
  %920 = vmatpush1.msra.mxu0 0.0
  %921 = vmatprep.subr.mxu0 0.0
  %922 = vmatpush1.msra.mxu0 0.0
  %923 = vmatprep.subr.mxu0 0.0
  %924 = vmatpush1.msra.mxu0 0.0
  %925 = vmatprep.subr.mxu0 0.0
  %926 = vmatpush1.msra.mxu0 0.0
  %927 = vmatprep.subr.mxu0 0.0
  %928 = vmatpush1.msra.mxu0 0.0
  %929 = vmatprep.subr.mxu0 0.0
  %930 = vmatpush1.msra.mxu0 0.0
  %931 = vmatprep.subr.mxu0 0.0
  %932 = vmatpush1.msra.mxu0 0.0
  %933 = vmatprep.subr.mxu0 0.0
  %934 = vmatpush1.msra.mxu0 0.0
  %935 = vmatprep.subr.mxu0 0.0
  %936 = vmatpush1.msra.mxu0 0.0
  %937 = vmatprep.subr.mxu0 0.0
  %938 = vmatpush1.msra.mxu0 0.0
  %939 = vmatprep.subr.mxu0 0.0
  %940 = vmatpush1.msra.mxu0 0.0
  %941 = vmatprep.subr.mxu0 0.0
  %942 = vmatpush1.msra.mxu0 0.0
  %943 = vmatprep.subr.mxu0 0.0
  %944 = vmatpush1.msra.mxu0 0.0
  %945 = vmatprep.subr.mxu0 0.0
  %946 = vmatpush1.msra.mxu0 0.0
  %947 = vmatprep.mubr.f32.mxu0 0.0
  %948 = vmatmul.mubr.f32.gmra.mrb[0].mxu0 %v422
  %v949 = vpop.f32.mrb[0].mxu0
  %v950 = vadd.f32 0.0, %v949
  %v951 = vpop.f32.mrb[0].mxu0
  %952 = vmatprep.mubr.f32.mxu0 0.0
  %953 = vmatmul.mubr.f32.gmra.mrb[0].mxu0 %v425
  %v954 = vpop.f32.mrb[0].mxu0
  %v955 = vadd.f32 0.0, %v954
  %v956 = vpop.f32.mrb[0].mxu0
  %957 = vdwg.mxu0
  %958 = vmatprep.subr.mxu0 0.0
  %959 = vmatpush1.msra.mxu0 %v48
  %960 = vmatprep.subr.mxu0 0.0
  %961 = vmatpush1.msra.mxu0 %v49
  %962 = vmatprep.subr.mxu0 0.0
  %963 = vmatpush1.msra.mxu0 %v50
  %964 = vmatprep.subr.mxu0 0.0
  %965 = vmatpush1.msra.mxu0 %v51
  %966 = vmatprep.subr.mxu0 0.0
  %967 = vmatpush1.msra.mxu0 0.0
  %968 = vmatprep.subr.mxu0 0.0
  %969 = vmatpush1.msra.mxu0 0.0
  %970 = vmatprep.subr.mxu0 0.0
  %971 = vmatpush1.msra.mxu0 0.0
  %972 = vmatprep.subr.mxu0 0.0
  %973 = vmatpush1.msra.mxu0 0.0
  %974 = vmatprep.subr.mxu0 0.0
  %975 = vmatpush1.msra.mxu0 0.0
  %976 = vmatprep.subr.mxu0 0.0
  %977 = vmatpush1.msra.mxu0 0.0
  %978 = vmatprep.subr.mxu0 0.0
  %979 = vmatpush1.msra.mxu0 0.0
  %980 = vmatprep.subr.mxu0 0.0
  %981 = vmatpush1.msra.mxu0 0.0
  %982 = vmatprep.subr.mxu0 0.0
  %983 = vmatpush1.msra.mxu0 0.0
  %984 = vmatprep.subr.mxu0 0.0
  %985 = vmatpush1.msra.mxu0 0.0
  %986 = vmatprep.subr.mxu0 0.0
  %987 = vmatpush1.msra.mxu0 0.0
  %988 = vmatprep.subr.mxu0 0.0
  %989 = vmatpush1.msra.mxu0 0.0
  %990 = vmatprep.subr.mxu0 0.0
  %991 = vmatpush1.msra.mxu0 0.0
  %992 = vmatprep.subr.mxu0 0.0
  %993 = vmatpush1.msra.mxu0 0.0
  %994 = vmatprep.subr.mxu0 0.0
  %995 = vmatpush1.msra.mxu0 0.0
  %996 = vmatprep.subr.mxu0 0.0
  %997 = vmatpush1.msra.mxu0 0.0
  %998 = vmatprep.subr.mxu0 0.0
  %999 = vmatpush1.msra.mxu0 0.0
  %1000 = vmatprep.subr.mxu0 0.0
  %1001 = vmatpush1.msra.mxu0 0.0
  %1002 = vmatprep.subr.mxu0 0.0
  %1003 = vmatpush1.msra.mxu0 0.0
  %1004 = vmatprep.subr.mxu0 0.0
  %1005 = vmatpush1.msra.mxu0 0.0
  %1006 = vmatprep.subr.mxu0 0.0
  %1007 = vmatpush1.msra.mxu0 0.0
  %1008 = vmatprep.subr.mxu0 0.0
  %1009 = vmatpush1.msra.mxu0 0.0
  %1010 = vmatprep.subr.mxu0 0.0
  %1011 = vmatpush1.msra.mxu0 0.0
  %1012 = vmatprep.subr.mxu0 0.0
  %1013 = vmatpush1.msra.mxu0 0.0
  %1014 = vmatprep.subr.mxu0 0.0
  %1015 = vmatpush1.msra.mxu0 0.0
  %1016 = vmatprep.subr.mxu0 0.0
  %1017 = vmatpush1.msra.mxu0 0.0
  %1018 = vmatprep.subr.mxu0 0.0
  %1019 = vmatpush1.msra.mxu0 0.0
  %1020 = vmatprep.subr.mxu0 0.0
  %1021 = vmatpush1.msra.mxu0 0.0
  %1022 = vmatprep.mubr.f32.mxu0 0.0
  %1023 = vmatmul.mubr.f32.gmra.mrb[0].mxu0 %v503
  %v1024 = vpop.f32.mrb[0].mxu0
  %v1025 = vadd.f32 0.0, %v1024
  %v1026 = vpop.f32.mrb[0].mxu0
  %1027 = vmatprep.mubr.f32.mxu0 0.0
  %1028 = vmatmul.mubr.f32.gmra.mrb[0].mxu0 %v506
  %v1029 = vpop.f32.mrb[0].mxu0
  %v1030 = vadd.f32 0.0, %v1029
  %v1031 = vpop.f32.mrb[0].mxu0
  %1032 = vdwg.mxu0
  %1033 = vmatprep.subr.mxu0 0.0
  %1034 = vmatpush1.msra.mxu0 %v52
  %1035 = vmatprep.subr.mxu0 0.0
  %1036 = vmatpush1.msra.mxu0 %v53
  %1037 = vmatprep.subr.mxu0 0.0
  %1038 = vmatpush1.msra.mxu0 %v54
  %1039 = vmatprep.subr.mxu0 0.0
  %1040 = vmatpush1.msra.mxu0 %v55
  %1041 = vmatprep.subr.mxu0 0.0
  %1042 = vmatpush1.msra.mxu0 0.0
  %1043 = vmatprep.subr.mxu0 0.0
  %1044 = vmatpush1.msra.mxu0 0.0
  %1045 = vmatprep.subr.mxu0 0.0
  %1046 = vmatpush1.msra.mxu0 0.0
  %1047 = vmatprep.subr.mxu0 0.0
  %1048 = vmatpush1.msra.mxu0 0.0
  %1049 = vmatprep.subr.mxu0 0.0
  %1050 = vmatpush1.msra.mxu0 0.0
  %1051 = vmatprep.subr.mxu0 0.0
  %1052 = vmatpush1.msra.mxu0 0.0
  %1053 = vmatprep.subr.mxu0 0.0
  %1054 = vmatpush1.msra.mxu0 0.0
  %1055 = vmatprep.subr.mxu0 0.0
  %1056 = vmatpush1.msra.mxu0 0.0
  %1057 = vmatprep.subr.mxu0 0.0
  %1058 = vmatpush1.msra.mxu0 0.0
  %1059 = vmatprep.subr.mxu0 0.0
  %1060 = vmatpush1.msra.mxu0 0.0
  %1061 = vmatprep.subr.mxu0 0.0
  %1062 = vmatpush1.msra.mxu0 0.0
  %1063 = vmatprep.subr.mxu0 0.0
  %1064 = vmatpush1.msra.mxu0 0.0
  %1065 = vmatprep.subr.mxu0 0.0
  %1066 = vmatpush1.msra.mxu0 0.0
  %1067 = vmatprep.subr.mxu0 0.0
  %1068 = vmatpush1.msra.mxu0 0.0
  %1069 = vmatprep.subr.mxu0 0.0
  %1070 = vmatpush1.msra.mxu0 0.0
  %1071 = vmatprep.subr.mxu0 0.0
  %1072 = vmatpush1.msra.mxu0 0.0
  %1073 = vmatprep.subr.mxu0 0.0
  %1074 = vmatpush1.msra.mxu0 0.0
  %1075 = vmatprep.subr.mxu0 0.0
  %1076 = vmatpush1.msra.mxu0 0.0
  %1077 = vmatprep.subr.mxu0 0.0
  %1078 = vmatpush1.msra.mxu0 0.0
  %1079 = vmatprep.subr.mxu0 0.0
  %1080 = vmatpush1.msra.mxu0 0.0
  %1081 = vmatprep.subr.mxu0 0.0
  %1082 = vmatpush1.msra.mxu0 0.0
  %1083 = vmatprep.subr.mxu0 0.0
  %1084 = vmatpush1.msra.mxu0 0.0
  %1085 = vmatprep.subr.mxu0 0.0
  %1086 = vmatpush1.msra.mxu0 0.0
  %1087 = vmatprep.subr.mxu0 0.0
  %1088 = vmatpush1.msra.mxu0 0.0
  %1089 = vmatprep.subr.mxu0 0.0
  %1090 = vmatpush1.msra.mxu0 0.0
  %1091 = vmatprep.subr.mxu0 0.0
  %1092 = vmatpush1.msra.mxu0 0.0
  %1093 = vmatprep.subr.mxu0 0.0
  %1094 = vmatpush1.msra.mxu0 0.0
  %1095 = vmatprep.subr.mxu0 0.0
  %1096 = vmatpush1.msra.mxu0 0.0
  %1097 = vmatprep.mubr.f32.mxu0 0.0
  %1098 = vmatmul.mubr.f32.gmra.mrb[0].mxu0 %v98
  %v1099 = vpop.f32.mrb[0].mxu0
  %v1100 = vadd.f32 0.0, %v1099
  %v1101 = vpop.f32.mrb[0].mxu0
  %1102 = vmatprep.mubr.f32.mxu0 0.0
  %1103 = vmatmul.mubr.f32.gmra.mrb[0].mxu0 %v101
  %v1104 = vpop.f32.mrb[0].mxu0
  %v1105 = vadd.f32 0.0, %v1104
  %v1106 = vpop.f32.mrb[0].mxu0
  %1107 = vdwg.mxu0
  %1108 = vmatprep.subr.mxu0 0.0
  %1109 = vmatpush1.msra.mxu0 %v52
  %1110 = vmatprep.subr.mxu0 0.0
  %1111 = vmatpush1.msra.mxu0 %v53
  %1112 = vmatprep.subr.mxu0 0.0
  %1113 = vmatpush1.msra.mxu0 %v54
  %1114 = vmatprep.subr.mxu0 0.0
  %1115 = vmatpush1.msra.mxu0 %v55
  %1116 = vmatprep.subr.mxu0 0.0
  %1117 = vmatpush1.msra.mxu0 0.0
  %1118 = vmatprep.subr.mxu0 0.0
  %1119 = vmatpush1.msra.mxu0 0.0
  %1120 = vmatprep.subr.mxu0 0.0
  %1121 = vmatpush1.msra.mxu0 0.0
  %1122 = vmatprep.subr.mxu0 0.0
  %1123 = vmatpush1.msra.mxu0 0.0
  %1124 = vmatprep.subr.mxu0 0.0
  %1125 = vmatpush1.msra.mxu0 0.0
  %1126 = vmatprep.subr.mxu0 0.0
  %1127 = vmatpush1.msra.mxu0 0.0
  %1128 = vmatprep.subr.mxu0 0.0
  %1129 = vmatpush1.msra.mxu0 0.0
  %1130 = vmatprep.subr.mxu0 0.0
  %1131 = vmatpush1.msra.mxu0 0.0
  %1132 = vmatprep.subr.mxu0 0.0
  %1133 = vmatpush1.msra.mxu0 0.0
  %1134 = vmatprep.subr.mxu0 0.0
  %1135 = vmatpush1.msra.mxu0 0.0
  %1136 = vmatprep.subr.mxu0 0.0
  %1137 = vmatpush1.msra.mxu0 0.0
  %1138 = vmatprep.subr.mxu0 0.0
  %1139 = vmatpush1.msra.mxu0 0.0
  %1140 = vmatprep.subr.mxu0 0.0
  %1141 = vmatpush1.msra.mxu0 0.0
  %1142 = vmatprep.subr.mxu0 0.0
  %1143 = vmatpush1.msra.mxu0 0.0
  %1144 = vmatprep.subr.mxu0 0.0
  %1145 = vmatpush1.msra.mxu0 0.0
  %1146 = vmatprep.subr.mxu0 0.0
  %1147 = vmatpush1.msra.mxu0 0.0
  %1148 = vmatprep.subr.mxu0 0.0
  %1149 = vmatpush1.msra.mxu0 0.0
  %1150 = vmatprep.subr.mxu0 0.0
  %1151 = vmatpush1.msra.mxu0 0.0
  %1152 = vmatprep.subr.mxu0 0.0
  %1153 = vmatpush1.msra.mxu0 0.0
  %1154 = vmatprep.subr.mxu0 0.0
  %1155 = vmatpush1.msra.mxu0 0.0
  %1156 = vmatprep.subr.mxu0 0.0
  %1157 = vmatpush1.msra.mxu0 0.0
  %1158 = vmatprep.subr.mxu0 0.0
  %1159 = vmatpush1.msra.mxu0 0.0
  %1160 = vmatprep.subr.mxu0 0.0
  %1161 = vmatpush1.msra.mxu0 0.0
  %1162 = vmatprep.subr.mxu0 0.0
  %1163 = vmatpush1.msra.mxu0 0.0
  %1164 = vmatprep.subr.mxu0 0.0
  %1165 = vmatpush1.msra.mxu0 0.0
  %1166 = vmatprep.subr.mxu0 0.0
  %1167 = vmatpush1.msra.mxu0 0.0
  %1168 = vmatprep.subr.mxu0 0.0
  %1169 = vmatpush1.msra.mxu0 0.0
  %1170 = vmatprep.subr.mxu0 0.0
  %1171 = vmatpush1.msra.mxu0 0.0
  %1172 = vmatprep.mubr.f32.mxu0 0.0
  %1173 = vmatmul.mubr.f32.gmra.mrb[0].mxu0 %v179
  %v1174 = vpop.f32.mrb[0].mxu0
  %v1175 = vadd.f32 0.0, %v1174
  %v1176 = vpop.f32.mrb[0].mxu0
  %1177 = vmatprep.mubr.f32.mxu0 0.0
  %1178 = vmatmul.mubr.f32.gmra.mrb[0].mxu0 %v182
  %v1179 = vpop.f32.mrb[0].mxu0
  %v1180 = vadd.f32 0.0, %v1179
  %v1181 = vpop.f32.mrb[0].mxu0
  %1182 = vdwg.mxu0
  %1183 = vmatprep.subr.mxu0 0.0
  %1184 = vmatpush1.msra.mxu0 %v52
  %1185 = vmatprep.subr.mxu0 0.0
  %1186 = vmatpush1.msra.mxu0 %v53
  %1187 = vmatprep.subr.mxu0 0.0
  %1188 = vmatpush1.msra.mxu0 %v54
  %1189 = vmatprep.subr.mxu0 0.0
  %1190 = vmatpush1.msra.mxu0 %v55
  %1191 = vmatprep.subr.mxu0 0.0
  %1192 = vmatpush1.msra.mxu0 0.0
  %1193 = vmatprep.subr.mxu0 0.0
  %1194 = vmatpush1.msra.mxu0 0.0
  %1195 = vmatprep.subr.mxu0 0.0
  %1196 = vmatpush1.msra.mxu0 0.0
  %1197 = vmatprep.subr.mxu0 0.0
  %1198 = vmatpush1.msra.mxu0 0.0
  %1199 = vmatprep.subr.mxu0 0.0
  %1200 = vmatpush1.msra.mxu0 0.0
  %1201 = vmatprep.subr.mxu0 0.0
  %1202 = vmatpush1.msra.mxu0 0.0
  %1203 = vmatprep.subr.mxu0 0.0
  %1204 = vmatpush1.msra.mxu0 0.0
  %1205 = vmatprep.subr.mxu0 0.0
  %1206 = vmatpush1.msra.mxu0 0.0
  %1207 = vmatprep.subr.mxu0 0.0
  %1208 = vmatpush1.msra.mxu0 0.0
  %1209 = vmatprep.subr.mxu0 0.0
  %1210 = vmatpush1.msra.mxu0 0.0
  %1211 = vmatprep.subr.mxu0 0.0
  %1212 = vmatpush1.msra.mxu0 0.0
  %1213 = vmatprep.subr.mxu0 0.0
  %1214 = vmatpush1.msra.mxu0 0.0
  %1215 = vmatprep.subr.mxu0 0.0
  %1216 = vmatpush1.msra.mxu0 0.0
  %1217 = vmatprep.subr.mxu0 0.0
  %1218 = vmatpush1.msra.mxu0 0.0
  %1219 = vmatprep.subr.mxu0 0.0
  %1220 = vmatpush1.msra.mxu0 0.0
  %1221 = vmatprep.subr.mxu0 0.0
  %1222 = vmatpush1.msra.mxu0 0.0
  %1223 = vmatprep.subr.mxu0 0.0
  %1224 = vmatpush1.msra.mxu0 0.0
  %1225 = vmatprep.subr.mxu0 0.0
  %1226 = vmatpush1.msra.mxu0 0.0
  %1227 = vmatprep.subr.mxu0 0.0
  %1228 = vmatpush1.msra.mxu0 0.0
  %1229 = vmatprep.subr.mxu0 0.0
  %1230 = vmatpush1.msra.mxu0 0.0
  %1231 = vmatprep.subr.mxu0 0.0
  %1232 = vmatpush1.msra.mxu0 0.0
  %1233 = vmatprep.subr.mxu0 0.0
  %1234 = vmatpush1.msra.mxu0 0.0
  %1235 = vmatprep.subr.mxu0 0.0
  %1236 = vmatpush1.msra.mxu0 0.0
  %1237 = vmatprep.subr.mxu0 0.0
  %1238 = vmatpush1.msra.mxu0 0.0
  %1239 = vmatprep.subr.mxu0 0.0
  %1240 = vmatpush1.msra.mxu0 0.0
  %1241 = vmatprep.subr.mxu0 0.0
  %1242 = vmatpush1.msra.mxu0 0.0
  %1243 = vmatprep.subr.mxu0 0.0
  %1244 = vmatpush1.msra.mxu0 0.0
  %1245 = vmatprep.subr.mxu0 0.0
  %1246 = vmatpush1.msra.mxu0 0.0
  %1247 = vmatprep.mubr.f32.mxu0 0.0
  %1248 = vmatmul.mubr.f32.gmra.mrb[0].mxu0 %v260
  %v1249 = vpop.f32.mrb[0].mxu0
  %v1250 = vadd.f32 0.0, %v1249
  %v1251 = vpop.f32.mrb[0].mxu0
  %1252 = vmatprep.mubr.f32.mxu0 0.0
  %1253 = vmatmul.mubr.f32.gmra.mrb[0].mxu0 %v263
  %v1254 = vpop.f32.mrb[0].mxu0
  %v1255 = vadd.f32 0.0, %v1254
  %v1256 = vpop.f32.mrb[0].mxu0
  %1257 = vdwg.mxu0
  %1258 = vmatprep.subr.mxu0 0.0
  %1259 = vmatpush1.msra.mxu0 %v52
  %1260 = vmatprep.subr.mxu0 0.0
  %1261 = vmatpush1.msra.mxu0 %v53
  %1262 = vmatprep.subr.mxu0 0.0
  %1263 = vmatpush1.msra.mxu0 %v54
  %1264 = vmatprep.subr.mxu0 0.0
  %1265 = vmatpush1.msra.mxu0 %v55
  %1266 = vmatprep.subr.mxu0 0.0
  %1267 = vmatpush1.msra.mxu0 0.0
  %1268 = vmatprep.subr.mxu0 0.0
  %1269 = vmatpush1.msra.mxu0 0.0
  %1270 = vmatprep.subr.mxu0 0.0
  %1271 = vmatpush1.msra.mxu0 0.0
  %1272 = vmatprep.subr.mxu0 0.0
  %1273 = vmatpush1.msra.mxu0 0.0
  %1274 = vmatprep.subr.mxu0 0.0
  %1275 = vmatpush1.msra.mxu0 0.0
  %1276 = vmatprep.subr.mxu0 0.0
  %1277 = vmatpush1.msra.mxu0 0.0
  %1278 = vmatprep.subr.mxu0 0.0
  %1279 = vmatpush1.msra.mxu0 0.0
  %1280 = vmatprep.subr.mxu0 0.0
  %1281 = vmatpush1.msra.mxu0 0.0
  %1282 = vmatprep.subr.mxu0 0.0
  %1283 = vmatpush1.msra.mxu0 0.0
  %1284 = vmatprep.subr.mxu0 0.0
  %1285 = vmatpush1.msra.mxu0 0.0
  %1286 = vmatprep.subr.mxu0 0.0
  %1287 = vmatpush1.msra.mxu0 0.0
  %1288 = vmatprep.subr.mxu0 0.0
  %1289 = vmatpush1.msra.mxu0 0.0
  %1290 = vmatprep.subr.mxu0 0.0
  %1291 = vmatpush1.msra.mxu0 0.0
  %1292 = vmatprep.subr.mxu0 0.0
  %1293 = vmatpush1.msra.mxu0 0.0
  %1294 = vmatprep.subr.mxu0 0.0
  %1295 = vmatpush1.msra.mxu0 0.0
  %1296 = vmatprep.subr.mxu0 0.0
  %1297 = vmatpush1.msra.mxu0 0.0
  %1298 = vmatprep.subr.mxu0 0.0
  %1299 = vmatpush1.msra.mxu0 0.0
  %1300 = vmatprep.subr.mxu0 0.0
  %1301 = vmatpush1.msra.mxu0 0.0
  %1302 = vmatprep.subr.mxu0 0.0
  %1303 = vmatpush1.msra.mxu0 0.0
  %1304 = vmatprep.subr.mxu0 0.0
  %1305 = vmatpush1.msra.mxu0 0.0
  %1306 = vmatprep.subr.mxu0 0.0
  %1307 = vmatpush1.msra.mxu0 0.0
  %1308 = vmatprep.subr.mxu0 0.0
  %1309 = vmatpush1.msra.mxu0 0.0
  %1310 = vmatprep.subr.mxu0 0.0
  %1311 = vmatpush1.msra.mxu0 0.0
  %1312 = vmatprep.subr.mxu0 0.0
  %1313 = vmatpush1.msra.mxu0 0.0
  %1314 = vmatprep.subr.mxu0 0.0
  %1315 = vmatpush1.msra.mxu0 0.0
  %1316 = vmatprep.subr.mxu0 0.0
  %1317 = vmatpush1.msra.mxu0 0.0
  %1318 = vmatprep.subr.mxu0 0.0
  %1319 = vmatpush1.msra.mxu0 0.0
  %1320 = vmatprep.subr.mxu0 0.0
  %1321 = vmatpush1.msra.mxu0 0.0
  %1322 = vmatprep.mubr.f32.mxu0 0.0
  %1323 = vmatmul.mubr.f32.gmra.mrb[0].mxu0 %v341
  %v1324 = vpop.f32.mrb[0].mxu0
  %v1325 = vadd.f32 0.0, %v1324
  %v1326 = vpop.f32.mrb[0].mxu0
  %1327 = vmatprep.mubr.f32.mxu0 0.0
  %1328 = vmatmul.mubr.f32.gmra.mrb[0].mxu0 %v344
  %v1329 = vpop.f32.mrb[0].mxu0
  %v1330 = vadd.f32 0.0, %v1329
  %v1331 = vpop.f32.mrb[0].mxu0
  %1332 = vdwg.mxu0
  %1333 = vmatprep.subr.mxu0 0.0
  %1334 = vmatpush1.msra.mxu0 %v52
  %1335 = vmatprep.subr.mxu0 0.0
  %1336 = vmatpush1.msra.mxu0 %v53
  %1337 = vmatprep.subr.mxu0 0.0
  %1338 = vmatpush1.msra.mxu0 %v54
  %1339 = vmatprep.subr.mxu0 0.0
  %1340 = vmatpush1.msra.mxu0 %v55
  %1341 = vmatprep.subr.mxu0 0.0
  %1342 = vmatpush1.msra.mxu0 0.0
  %1343 = vmatprep.subr.mxu0 0.0
  %1344 = vmatpush1.msra.mxu0 0.0
  %1345 = vmatprep.subr.mxu0 0.0
  %1346 = vmatpush1.msra.mxu0 0.0
  %1347 = vmatprep.subr.mxu0 0.0
  %1348 = vmatpush1.msra.mxu0 0.0
  %1349 = vmatprep.subr.mxu0 0.0
  %1350 = vmatpush1.msra.mxu0 0.0
  %1351 = vmatprep.subr.mxu0 0.0
  %1352 = vmatpush1.msra.mxu0 0.0
  %1353 = vmatprep.subr.mxu0 0.0
  %1354 = vmatpush1.msra.mxu0 0.0
  %1355 = vmatprep.subr.mxu0 0.0
  %1356 = vmatpush1.msra.mxu0 0.0
  %1357 = vmatprep.subr.mxu0 0.0
  %1358 = vmatpush1.msra.mxu0 0.0
  %1359 = vmatprep.subr.mxu0 0.0
  %1360 = vmatpush1.msra.mxu0 0.0
  %1361 = vmatprep.subr.mxu0 0.0
  %1362 = vmatpush1.msra.mxu0 0.0
  %1363 = vmatprep.subr.mxu0 0.0
  %1364 = vmatpush1.msra.mxu0 0.0
  %1365 = vmatprep.subr.mxu0 0.0
  %1366 = vmatpush1.msra.mxu0 0.0
  %1367 = vmatprep.subr.mxu0 0.0
  %1368 = vmatpush1.msra.mxu0 0.0
  %1369 = vmatprep.subr.mxu0 0.0
  %1370 = vmatpush1.msra.mxu0 0.0
  %1371 = vmatprep.subr.mxu0 0.0
  %1372 = vmatpush1.msra.mxu0 0.0
  %1373 = vmatprep.subr.mxu0 0.0
  %1374 = vmatpush1.msra.mxu0 0.0
  %1375 = vmatprep.subr.mxu0 0.0
  %1376 = vmatpush1.msra.mxu0 0.0
  %1377 = vmatprep.subr.mxu0 0.0
  %1378 = vmatpush1.msra.mxu0 0.0
  %1379 = vmatprep.subr.mxu0 0.0
  %1380 = vmatpush1.msra.mxu0 0.0
  %1381 = vmatprep.subr.mxu0 0.0
  %1382 = vmatpush1.msra.mxu0 0.0
  %1383 = vmatprep.subr.mxu0 0.0
  %1384 = vmatpush1.msra.mxu0 0.0
  %1385 = vmatprep.subr.mxu0 0.0
  %1386 = vmatpush1.msra.mxu0 0.0
  %1387 = vmatprep.subr.mxu0 0.0
  %1388 = vmatpush1.msra.mxu0 0.0
  %1389 = vmatprep.subr.mxu0 0.0
  %1390 = vmatpush1.msra.mxu0 0.0
  %1391 = vmatprep.subr.mxu0 0.0
  %1392 = vmatpush1.msra.mxu0 0.0
  %1393 = vmatprep.subr.mxu0 0.0
  %1394 = vmatpush1.msra.mxu0 0.0
  %1395 = vmatprep.subr.mxu0 0.0
  %1396 = vmatpush1.msra.mxu0 0.0
  %1397 = vmatprep.mubr.f32.mxu0 0.0
  %1398 = vmatmul.mubr.f32.gmra.mrb[0].mxu0 %v422
  %v1399 = vpop.f32.mrb[0].mxu0
  %v1400 = vadd.f32 0.0, %v1399
  %v1401 = vpop.f32.mrb[0].mxu0
  %1402 = vmatprep.mubr.f32.mxu0 0.0
  %1403 = vmatmul.mubr.f32.gmra.mrb[0].mxu0 %v425
  %v1404 = vpop.f32.mrb[0].mxu0
  %v1405 = vadd.f32 0.0, %v1404
  %v1406 = vpop.f32.mrb[0].mxu0
  %1407 = vdwg.mxu0
  %1408 = vmatprep.subr.mxu0 0.0
  %1409 = vmatpush1.msra.mxu0 %v52
  %1410 = vmatprep.subr.mxu0 0.0
  %1411 = vmatpush1.msra.mxu0 %v53
  %1412 = vmatprep.subr.mxu0 0.0
  %1413 = vmatpush1.msra.mxu0 %v54
  %1414 = vmatprep.subr.mxu0 0.0
  %1415 = vmatpush1.msra.mxu0 %v55
  %1416 = vmatprep.subr.mxu0 0.0
  %1417 = vmatpush1.msra.mxu0 0.0
  %1418 = vmatprep.subr.mxu0 0.0
  %1419 = vmatpush1.msra.mxu0 0.0
  %1420 = vmatprep.subr.mxu0 0.0
  %1421 = vmatpush1.msra.mxu0 0.0
  %1422 = vmatprep.subr.mxu0 0.0
  %1423 = vmatpush1.msra.mxu0 0.0
  %1424 = vmatprep.subr.mxu0 0.0
  %1425 = vmatpush1.msra.mxu0 0.0
  %1426 = vmatprep.subr.mxu0 0.0
  %1427 = vmatpush1.msra.mxu0 0.0
  %1428 = vmatprep.subr.mxu0 0.0
  %1429 = vmatpush1.msra.mxu0 0.0
  %1430 = vmatprep.subr.mxu0 0.0
  %1431 = vmatpush1.msra.mxu0 0.0
  %1432 = vmatprep.subr.mxu0 0.0
  %1433 = vmatpush1.msra.mxu0 0.0
  %1434 = vmatprep.subr.mxu0 0.0
  %1435 = vmatpush1.msra.mxu0 0.0
  %1436 = vmatprep.subr.mxu0 0.0
  %1437 = vmatpush1.msra.mxu0 0.0
  %1438 = vmatprep.subr.mxu0 0.0
  %1439 = vmatpush1.msra.mxu0 0.0
  %1440 = vmatprep.subr.mxu0 0.0
  %1441 = vmatpush1.msra.mxu0 0.0
  %1442 = vmatprep.subr.mxu0 0.0
  %1443 = vmatpush1.msra.mxu0 0.0
  %1444 = vmatprep.subr.mxu0 0.0
  %1445 = vmatpush1.msra.mxu0 0.0
  %1446 = vmatprep.subr.mxu0 0.0
  %1447 = vmatpush1.msra.mxu0 0.0
  %1448 = vmatprep.subr.mxu0 0.0
  %1449 = vmatpush1.msra.mxu0 0.0
  %1450 = vmatprep.subr.mxu0 0.0
  %1451 = vmatpush1.msra.mxu0 0.0
  %1452 = vmatprep.subr.mxu0 0.0
  %1453 = vmatpush1.msra.mxu0 0.0
  %1454 = vmatprep.subr.mxu0 0.0
  %1455 = vmatpush1.msra.mxu0 0.0
  %1456 = vmatprep.subr.mxu0 0.0
  %1457 = vmatpush1.msra.mxu0 0.0
  %1458 = vmatprep.subr.mxu0 0.0
  %1459 = vmatpush1.msra.mxu0 0.0
  %1460 = vmatprep.subr.mxu0 0.0
  %1461 = vmatpush1.msra.mxu0 0.0
  %1462 = vmatprep.subr.mxu0 0.0
  %1463 = vmatpush1.msra.mxu0 0.0
  %1464 = vmatprep.subr.mxu0 0.0
  %1465 = vmatpush1.msra.mxu0 0.0
  %1466 = vmatprep.subr.mxu0 0.0
  %1467 = vmatpush1.msra.mxu0 0.0
  %1468 = vmatprep.subr.mxu0 0.0
  %1469 = vmatpush1.msra.mxu0 0.0
  %1470 = vmatprep.subr.mxu0 0.0
  %1471 = vmatpush1.msra.mxu0 0.0
  %1472 = vmatprep.mubr.f32.mxu0 0.0
  %1473 = vmatmul.mubr.f32.gmra.mrb[0].mxu0 %v503
  %v1474 = vpop.f32.mrb[0].mxu0
  %v1475 = vadd.f32 0.0, %v1474
  %v1476 = vpop.f32.mrb[0].mxu0
  %1477 = vmatprep.mubr.f32.mxu0 0.0
  %1478 = vmatmul.mubr.f32.gmra.mrb[0].mxu0 %v506
  %v1479 = vpop.f32.mrb[0].mxu0
  %v1480 = vadd.f32 0.0, %v1479
  %v1481 = vpop.f32.mrb[0].mxu0
  %1482 = vdwg.mxu0
  %1483 = vmatprep.subr.mxu0 0.0
  %1484 = vmatpush1.msra.mxu0 %v56
  %1485 = vmatprep.subr.mxu0 0.0
  %1486 = vmatpush1.msra.mxu0 %v57
  %1487 = vmatprep.subr.mxu0 0.0
  %1488 = vmatpush1.msra.mxu0 %v58
  %1489 = vmatprep.subr.mxu0 0.0
  %1490 = vmatpush1.msra.mxu0 %v59
  %1491 = vmatprep.subr.mxu0 0.0
  %1492 = vmatpush1.msra.mxu0 0.0
  %1493 = vmatprep.subr.mxu0 0.0
  %1494 = vmatpush1.msra.mxu0 0.0
  %1495 = vmatprep.subr.mxu0 0.0
  %1496 = vmatpush1.msra.mxu0 0.0
  %1497 = vmatprep.subr.mxu0 0.0
  %1498 = vmatpush1.msra.mxu0 0.0
  %1499 = vmatprep.subr.mxu0 0.0
  %1500 = vmatpush1.msra.mxu0 0.0
  %1501 = vmatprep.subr.mxu0 0.0
  %1502 = vmatpush1.msra.mxu0 0.0
  %1503 = vmatprep.subr.mxu0 0.0
  %1504 = vmatpush1.msra.mxu0 0.0
  %1505 = vmatprep.subr.mxu0 0.0
  %1506 = vmatpush1.msra.mxu0 0.0
  %1507 = vmatprep.subr.mxu0 0.0
  %1508 = vmatpush1.msra.mxu0 0.0
  %1509 = vmatprep.subr.mxu0 0.0
  %1510 = vmatpush1.msra.mxu0 0.0
  %1511 = vmatprep.subr.mxu0 0.0
  %1512 = vmatpush1.msra.mxu0 0.0
  %1513 = vmatprep.subr.mxu0 0.0
  %1514 = vmatpush1.msra.mxu0 0.0
  %1515 = vmatprep.subr.mxu0 0.0
  %1516 = vmatpush1.msra.mxu0 0.0
  %1517 = vmatprep.subr.mxu0 0.0
  %1518 = vmatpush1.msra.mxu0 0.0
  %1519 = vmatprep.subr.mxu0 0.0
  %1520 = vmatpush1.msra.mxu0 0.0
  %1521 = vmatprep.subr.mxu0 0.0
  %1522 = vmatpush1.msra.mxu0 0.0
  %1523 = vmatprep.subr.mxu0 0.0
  %1524 = vmatpush1.msra.mxu0 0.0
  %1525 = vmatprep.subr.mxu0 0.0
  %1526 = vmatpush1.msra.mxu0 0.0
  %1527 = vmatprep.subr.mxu0 0.0
  %1528 = vmatpush1.msra.mxu0 0.0
  %1529 = vmatprep.subr.mxu0 0.0
  %1530 = vmatpush1.msra.mxu0 0.0
  %1531 = vmatprep.subr.mxu0 0.0
  %1532 = vmatpush1.msra.mxu0 0.0
  %1533 = vmatprep.subr.mxu0 0.0
  %1534 = vmatpush1.msra.mxu0 0.0
  %1535 = vmatprep.subr.mxu0 0.0
  %1536 = vmatpush1.msra.mxu0 0.0
  %1537 = vmatprep.subr.mxu0 0.0
  %1538 = vmatpush1.msra.mxu0 0.0
  %1539 = vmatprep.subr.mxu0 0.0
  %1540 = vmatpush1.msra.mxu0 0.0
  %1541 = vmatprep.subr.mxu0 0.0
  %1542 = vmatpush1.msra.mxu0 0.0
  %1543 = vmatprep.subr.mxu0 0.0
  %1544 = vmatpush1.msra.mxu0 0.0
  %1545 = vmatprep.subr.mxu0 0.0
  %1546 = vmatpush1.msra.mxu0 0.0
  %1547 = vmatprep.mubr.f32.mxu0 0.0
  %1548 = vmatmul.mubr.f32.gmra.mrb[0].mxu0 %v98
  %v1549 = vpop.f32.mrb[0].mxu0
  %v1550 = vadd.f32 0.0, %v1549
  %v1551 = vpop.f32.mrb[0].mxu0
  %1552 = vmatprep.mubr.f32.mxu0 0.0
  %1553 = vmatmul.mubr.f32.gmra.mrb[0].mxu0 %v101
  %v1554 = vpop.f32.mrb[0].mxu0
  %v1555 = vadd.f32 0.0, %v1554
  %v1556 = vpop.f32.mrb[0].mxu0
  %1557 = vdwg.mxu0
  %1558 = vmatprep.subr.mxu0 0.0
  %1559 = vmatpush1.msra.mxu0 %v56
  %1560 = vmatprep.subr.mxu0 0.0
  %1561 = vmatpush1.msra.mxu0 %v57
  %1562 = vmatprep.subr.mxu0 0.0
  %1563 = vmatpush1.msra.mxu0 %v58
  %1564 = vmatprep.subr.mxu0 0.0
  %1565 = vmatpush1.msra.mxu0 %v59
  %1566 = vmatprep.subr.mxu0 0.0
  %1567 = vmatpush1.msra.mxu0 0.0
  %1568 = vmatprep.subr.mxu0 0.0
  %1569 = vmatpush1.msra.mxu0 0.0
  %1570 = vmatprep.subr.mxu0 0.0
  %1571 = vmatpush1.msra.mxu0 0.0
  %1572 = vmatprep.subr.mxu0 0.0
  %1573 = vmatpush1.msra.mxu0 0.0
  %1574 = vmatprep.subr.mxu0 0.0
  %1575 = vmatpush1.msra.mxu0 0.0
  %1576 = vmatprep.subr.mxu0 0.0
  %1577 = vmatpush1.msra.mxu0 0.0
  %1578 = vmatprep.subr.mxu0 0.0
  %1579 = vmatpush1.msra.mxu0 0.0
  %1580 = vmatprep.subr.mxu0 0.0
  %1581 = vmatpush1.msra.mxu0 0.0
  %1582 = vmatprep.subr.mxu0 0.0
  %1583 = vmatpush1.msra.mxu0 0.0
  %1584 = vmatprep.subr.mxu0 0.0
  %1585 = vmatpush1.msra.mxu0 0.0
  %1586 = vmatprep.subr.mxu0 0.0
  %1587 = vmatpush1.msra.mxu0 0.0
  %1588 = vmatprep.subr.mxu0 0.0
  %1589 = vmatpush1.msra.mxu0 0.0
  %1590 = vmatprep.subr.mxu0 0.0
  %1591 = vmatpush1.msra.mxu0 0.0
  %1592 = vmatprep.subr.mxu0 0.0
  %1593 = vmatpush1.msra.mxu0 0.0
  %1594 = vmatprep.subr.mxu0 0.0
  %1595 = vmatpush1.msra.mxu0 0.0
  %1596 = vmatprep.subr.mxu0 0.0
  %1597 = vmatpush1.msra.mxu0 0.0
  %1598 = vmatprep.subr.mxu0 0.0
  %1599 = vmatpush1.msra.mxu0 0.0
  %1600 = vmatprep.subr.mxu0 0.0
  %1601 = vmatpush1.msra.mxu0 0.0
  %1602 = vmatprep.subr.mxu0 0.0
  %1603 = vmatpush1.msra.mxu0 0.0
  %1604 = vmatprep.subr.mxu0 0.0
  %1605 = vmatpush1.msra.mxu0 0.0
  %1606 = vmatprep.subr.mxu0 0.0
  %1607 = vmatpush1.msra.mxu0 0.0
  %1608 = vmatprep.subr.mxu0 0.0
  %1609 = vmatpush1.msra.mxu0 0.0
  %1610 = vmatprep.subr.mxu0 0.0
  %1611 = vmatpush1.msra.mxu0 0.0
  %1612 = vmatprep.subr.mxu0 0.0
  %1613 = vmatpush1.msra.mxu0 0.0
  %1614 = vmatprep.subr.mxu0 0.0
  %1615 = vmatpush1.msra.mxu0 0.0
  %1616 = vmatprep.subr.mxu0 0.0
  %1617 = vmatpush1.msra.mxu0 0.0
  %1618 = vmatprep.subr.mxu0 0.0
  %1619 = vmatpush1.msra.mxu0 0.0
  %1620 = vmatprep.subr.mxu0 0.0
  %1621 = vmatpush1.msra.mxu0 0.0
  %1622 = vmatprep.mubr.f32.mxu0 0.0
  %1623 = vmatmul.mubr.f32.gmra.mrb[0].mxu0 %v179
  %v1624 = vpop.f32.mrb[0].mxu0
  %v1625 = vadd.f32 0.0, %v1624
  %v1626 = vpop.f32.mrb[0].mxu0
  %1627 = vmatprep.mubr.f32.mxu0 0.0
  %1628 = vmatmul.mubr.f32.gmra.mrb[0].mxu0 %v182
  %v1629 = vpop.f32.mrb[0].mxu0
  %v1630 = vadd.f32 0.0, %v1629
  %v1631 = vpop.f32.mrb[0].mxu0
  %1632 = vdwg.mxu0
  %1633 = vmatprep.subr.mxu0 0.0
  %1634 = vmatpush1.msra.mxu0 %v56
  %1635 = vmatprep.subr.mxu0 0.0
  %1636 = vmatpush1.msra.mxu0 %v57
  %1637 = vmatprep.subr.mxu0 0.0
  %1638 = vmatpush1.msra.mxu0 %v58
  %1639 = vmatprep.subr.mxu0 0.0
  %1640 = vmatpush1.msra.mxu0 %v59
  %1641 = vmatprep.subr.mxu0 0.0
  %1642 = vmatpush1.msra.mxu0 0.0
  %1643 = vmatprep.subr.mxu0 0.0
  %1644 = vmatpush1.msra.mxu0 0.0
  %1645 = vmatprep.subr.mxu0 0.0
  %1646 = vmatpush1.msra.mxu0 0.0
  %1647 = vmatprep.subr.mxu0 0.0
  %1648 = vmatpush1.msra.mxu0 0.0
  %1649 = vmatprep.subr.mxu0 0.0
  %1650 = vmatpush1.msra.mxu0 0.0
  %1651 = vmatprep.subr.mxu0 0.0
  %1652 = vmatpush1.msra.mxu0 0.0
  %1653 = vmatprep.subr.mxu0 0.0
  %1654 = vmatpush1.msra.mxu0 0.0
  %1655 = vmatprep.subr.mxu0 0.0
  %1656 = vmatpush1.msra.mxu0 0.0
  %1657 = vmatprep.subr.mxu0 0.0
  %1658 = vmatpush1.msra.mxu0 0.0
  %1659 = vmatprep.subr.mxu0 0.0
  %1660 = vmatpush1.msra.mxu0 0.0
  %1661 = vmatprep.subr.mxu0 0.0
  %1662 = vmatpush1.msra.mxu0 0.0
  %1663 = vmatprep.subr.mxu0 0.0
  %1664 = vmatpush1.msra.mxu0 0.0
  %1665 = vmatprep.subr.mxu0 0.0
  %1666 = vmatpush1.msra.mxu0 0.0
  %1667 = vmatprep.subr.mxu0 0.0
  %1668 = vmatpush1.msra.mxu0 0.0
  %1669 = vmatprep.subr.mxu0 0.0
  %1670 = vmatpush1.msra.mxu0 0.0
  %1671 = vmatprep.subr.mxu0 0.0
  %1672 = vmatpush1.msra.mxu0 0.0
  %1673 = vmatprep.subr.mxu0 0.0
  %1674 = vmatpush1.msra.mxu0 0.0
  %1675 = vmatprep.subr.mxu0 0.0
  %1676 = vmatpush1.msra.mxu0 0.0
  %1677 = vmatprep.subr.mxu0 0.0
  %1678 = vmatpush1.msra.mxu0 0.0
  %1679 = vmatprep.subr.mxu0 0.0
  %1680 = vmatpush1.msra.mxu0 0.0
  %1681 = vmatprep.subr.mxu0 0.0
  %1682 = vmatpush1.msra.mxu0 0.0
  %1683 = vmatprep.subr.mxu0 0.0
  %1684 = vmatpush1.msra.mxu0 0.0
  %1685 = vmatprep.subr.mxu0 0.0
  %1686 = vmatpush1.msra.mxu0 0.0
  %1687 = vmatprep.subr.mxu0 0.0
  %1688 = vmatpush1.msra.mxu0 0.0
  %1689 = vmatprep.subr.mxu0 0.0
  %1690 = vmatpush1.msra.mxu0 0.0
  %1691 = vmatprep.subr.mxu0 0.0
  %1692 = vmatpush1.msra.mxu0 0.0
  %1693 = vmatprep.subr.mxu0 0.0
  %1694 = vmatpush1.msra.mxu0 0.0
  %1695 = vmatprep.subr.mxu0 0.0
  %1696 = vmatpush1.msra.mxu0 0.0
  %1697 = vmatprep.mubr.f32.mxu0 0.0
  %1698 = vmatmul.mubr.f32.gmra.mrb[0].mxu0 %v260
  %v1699 = vpop.f32.mrb[0].mxu0
  %v1700 = vadd.f32 0.0, %v1699
  %v1701 = vpop.f32.mrb[0].mxu0
  %1702 = vmatprep.mubr.f32.mxu0 0.0
  %1703 = vmatmul.mubr.f32.gmra.mrb[0].mxu0 %v263
  %v1704 = vpop.f32.mrb[0].mxu0
  %v1705 = vadd.f32 0.0, %v1704
  %v1706 = vpop.f32.mrb[0].mxu0
  %1707 = vdwg.mxu0
  %1708 = vmatprep.subr.mxu0 0.0
  %1709 = vmatpush1.msra.mxu0 %v56
  %1710 = vmatprep.subr.mxu0 0.0
  %1711 = vmatpush1.msra.mxu0 %v57
  %1712 = vmatprep.subr.mxu0 0.0
  %1713 = vmatpush1.msra.mxu0 %v58
  %1714 = vmatprep.subr.mxu0 0.0
  %1715 = vmatpush1.msra.mxu0 %v59
  %1716 = vmatprep.subr.mxu0 0.0
  %1717 = vmatpush1.msra.mxu0 0.0
  %1718 = vmatprep.subr.mxu0 0.0
  %1719 = vmatpush1.msra.mxu0 0.0
  %1720 = vmatprep.subr.mxu0 0.0
  %1721 = vmatpush1.msra.mxu0 0.0
  %1722 = vmatprep.subr.mxu0 0.0
  %1723 = vmatpush1.msra.mxu0 0.0
  %1724 = vmatprep.subr.mxu0 0.0
  %1725 = vmatpush1.msra.mxu0 0.0
  %1726 = vmatprep.subr.mxu0 0.0
  %1727 = vmatpush1.msra.mxu0 0.0
  %1728 = vmatprep.subr.mxu0 0.0
  %1729 = vmatpush1.msra.mxu0 0.0
  %1730 = vmatprep.subr.mxu0 0.0
  %1731 = vmatpush1.msra.mxu0 0.0
  %1732 = vmatprep.subr.mxu0 0.0
  %1733 = vmatpush1.msra.mxu0 0.0
  %1734 = vmatprep.subr.mxu0 0.0
  %1735 = vmatpush1.msra.mxu0 0.0
  %1736 = vmatprep.subr.mxu0 0.0
  %1737 = vmatpush1.msra.mxu0 0.0
  %1738 = vmatprep.subr.mxu0 0.0
  %1739 = vmatpush1.msra.mxu0 0.0
  %1740 = vmatprep.subr.mxu0 0.0
  %1741 = vmatpush1.msra.mxu0 0.0
  %1742 = vmatprep.subr.mxu0 0.0
  %1743 = vmatpush1.msra.mxu0 0.0
  %1744 = vmatprep.subr.mxu0 0.0
  %1745 = vmatpush1.msra.mxu0 0.0
  %1746 = vmatprep.subr.mxu0 0.0
  %1747 = vmatpush1.msra.mxu0 0.0
  %1748 = vmatprep.subr.mxu0 0.0
  %1749 = vmatpush1.msra.mxu0 0.0
  %1750 = vmatprep.subr.mxu0 0.0
  %1751 = vmatpush1.msra.mxu0 0.0
  %1752 = vmatprep.subr.mxu0 0.0
  %1753 = vmatpush1.msra.mxu0 0.0
  %1754 = vmatprep.subr.mxu0 0.0
  %1755 = vmatpush1.msra.mxu0 0.0
  %1756 = vmatprep.subr.mxu0 0.0
  %1757 = vmatpush1.msra.mxu0 0.0
  %1758 = vmatprep.subr.mxu0 0.0
  %1759 = vmatpush1.msra.mxu0 0.0
  %1760 = vmatprep.subr.mxu0 0.0
  %1761 = vmatpush1.msra.mxu0 0.0
  %1762 = vmatprep.subr.mxu0 0.0
  %1763 = vmatpush1.msra.mxu0 0.0
  %1764 = vmatprep.subr.mxu0 0.0
  %1765 = vmatpush1.msra.mxu0 0.0
  %1766 = vmatprep.subr.mxu0 0.0
  %1767 = vmatpush1.msra.mxu0 0.0
  %1768 = vmatprep.subr.mxu0 0.0
  %1769 = vmatpush1.msra.mxu0 0.0
  %1770 = vmatprep.subr.mxu0 0.0
  %1771 = vmatpush1.msra.mxu0 0.0
  %1772 = vmatprep.mubr.f32.mxu0 0.0
  %1773 = vmatmul.mubr.f32.gmra.mrb[0].mxu0 %v341
  %v1774 = vpop.f32.mrb[0].mxu0
  %v1775 = vadd.f32 0.0, %v1774
  %v1776 = vpop.f32.mrb[0].mxu0
  %1777 = vmatprep.mubr.f32.mxu0 0.0
  %1778 = vmatmul.mubr.f32.gmra.mrb[0].mxu0 %v344
  %v1779 = vpop.f32.mrb[0].mxu0
  %v1780 = vadd.f32 0.0, %v1779
  %v1781 = vpop.f32.mrb[0].mxu0
  %1782 = vdwg.mxu0
  %1783 = vmatprep.subr.mxu0 0.0
  %1784 = vmatpush1.msra.mxu0 %v56
  %1785 = vmatprep.subr.mxu0 0.0
  %1786 = vmatpush1.msra.mxu0 %v57
  %1787 = vmatprep.subr.mxu0 0.0
  %1788 = vmatpush1.msra.mxu0 %v58
  %1789 = vmatprep.subr.mxu0 0.0
  %1790 = vmatpush1.msra.mxu0 %v59
  %1791 = vmatprep.subr.mxu0 0.0
  %1792 = vmatpush1.msra.mxu0 0.0
  %1793 = vmatprep.subr.mxu0 0.0
  %1794 = vmatpush1.msra.mxu0 0.0
  %1795 = vmatprep.subr.mxu0 0.0
  %1796 = vmatpush1.msra.mxu0 0.0
  %1797 = vmatprep.subr.mxu0 0.0
  %1798 = vmatpush1.msra.mxu0 0.0
  %1799 = vmatprep.subr.mxu0 0.0
  %1800 = vmatpush1.msra.mxu0 0.0
  %1801 = vmatprep.subr.mxu0 0.0
  %1802 = vmatpush1.msra.mxu0 0.0
  %1803 = vmatprep.subr.mxu0 0.0
  %1804 = vmatpush1.msra.mxu0 0.0
  %1805 = vmatprep.subr.mxu0 0.0
  %1806 = vmatpush1.msra.mxu0 0.0
  %1807 = vmatprep.subr.mxu0 0.0
  %1808 = vmatpush1.msra.mxu0 0.0
  %1809 = vmatprep.subr.mxu0 0.0
  %1810 = vmatpush1.msra.mxu0 0.0
  %1811 = vmatprep.subr.mxu0 0.0
  %1812 = vmatpush1.msra.mxu0 0.0
  %1813 = vmatprep.subr.mxu0 0.0
  %1814 = vmatpush1.msra.mxu0 0.0
  %1815 = vmatprep.subr.mxu0 0.0
  %1816 = vmatpush1.msra.mxu0 0.0
  %1817 = vmatprep.subr.mxu0 0.0
  %1818 = vmatpush1.msra.mxu0 0.0
  %1819 = vmatprep.subr.mxu0 0.0
  %1820 = vmatpush1.msra.mxu0 0.0
  %1821 = vmatprep.subr.mxu0 0.0
  %1822 = vmatpush1.msra.mxu0 0.0
  %1823 = vmatprep.subr.mxu0 0.0
  %1824 = vmatpush1.msra.mxu0 0.0
  %1825 = vmatprep.subr.mxu0 0.0
  %1826 = vmatpush1.msra.mxu0 0.0
  %1827 = vmatprep.subr.mxu0 0.0
  %1828 = vmatpush1.msra.mxu0 0.0
  %1829 = vmatprep.subr.mxu0 0.0
  %1830 = vmatpush1.msra.mxu0 0.0
  %1831 = vmatprep.subr.mxu0 0.0
  %1832 = vmatpush1.msra.mxu0 0.0
  %1833 = vmatprep.subr.mxu0 0.0
  %1834 = vmatpush1.msra.mxu0 0.0
  %1835 = vmatprep.subr.mxu0 0.0
  %1836 = vmatpush1.msra.mxu0 0.0
  %1837 = vmatprep.subr.mxu0 0.0
  %1838 = vmatpush1.msra.mxu0 0.0
  %1839 = vmatprep.subr.mxu0 0.0
  %1840 = vmatpush1.msra.mxu0 0.0
  %1841 = vmatprep.subr.mxu0 0.0
  %1842 = vmatpush1.msra.mxu0 0.0
  %1843 = vmatprep.subr.mxu0 0.0
  %1844 = vmatpush1.msra.mxu0 0.0
  %1845 = vmatprep.subr.mxu0 0.0
  %1846 = vmatpush1.msra.mxu0 0.0
  %1847 = vmatprep.mubr.f32.mxu0 0.0
  %1848 = vmatmul.mubr.f32.gmra.mrb[0].mxu0 %v422
  %v1849 = vpop.f32.mrb[0].mxu0
  %v1850 = vadd.f32 0.0, %v1849
  %v1851 = vpop.f32.mrb[0].mxu0
  %1852 = vmatprep.mubr.f32.mxu0 0.0
  %1853 = vmatmul.mubr.f32.gmra.mrb[0].mxu0 %v425
  %v1854 = vpop.f32.mrb[0].mxu0
  %v1855 = vadd.f32 0.0, %v1854
  %v1856 = vpop.f32.mrb[0].mxu0
  %1857 = vdwg.mxu0
  %1858 = vmatprep.subr.mxu0 0.0
  %1859 = vmatpush1.msra.mxu0 %v56
  %1860 = vmatprep.subr.mxu0 0.0
  %1861 = vmatpush1.msra.mxu0 %v57
  %1862 = vmatprep.subr.mxu0 0.0
  %1863 = vmatpush1.msra.mxu0 %v58
  %1864 = vmatprep.subr.mxu0 0.0
  %1865 = vmatpush1.msra.mxu0 %v59
  %1866 = vmatprep.subr.mxu0 0.0
  %1867 = vmatpush1.msra.mxu0 0.0
  %1868 = vmatprep.subr.mxu0 0.0
  %1869 = vmatpush1.msra.mxu0 0.0
  %1870 = vmatprep.subr.mxu0 0.0
  %1871 = vmatpush1.msra.mxu0 0.0
  %1872 = vmatprep.subr.mxu0 0.0
  %1873 = vmatpush1.msra.mxu0 0.0
  %1874 = vmatprep.subr.mxu0 0.0
  %1875 = vmatpush1.msra.mxu0 0.0
  %1876 = vmatprep.subr.mxu0 0.0
  %1877 = vmatpush1.msra.mxu0 0.0
  %1878 = vmatprep.subr.mxu0 0.0
  %1879 = vmatpush1.msra.mxu0 0.0
  %1880 = vmatprep.subr.mxu0 0.0
  %1881 = vmatpush1.msra.mxu0 0.0
  %1882 = vmatprep.subr.mxu0 0.0
  %1883 = vmatpush1.msra.mxu0 0.0
  %1884 = vmatprep.subr.mxu0 0.0
  %1885 = vmatpush1.msra.mxu0 0.0
  %1886 = vmatprep.subr.mxu0 0.0
  %1887 = vmatpush1.msra.mxu0 0.0
  %1888 = vmatprep.subr.mxu0 0.0
  %1889 = vmatpush1.msra.mxu0 0.0
  %1890 = vmatprep.subr.mxu0 0.0
  %1891 = vmatpush1.msra.mxu0 0.0
  %1892 = vmatprep.subr.mxu0 0.0
  %1893 = vmatpush1.msra.mxu0 0.0
  %1894 = vmatprep.subr.mxu0 0.0
  %1895 = vmatpush1.msra.mxu0 0.0
  %1896 = vmatprep.subr.mxu0 0.0
  %1897 = vmatpush1.msra.mxu0 0.0
  %1898 = vmatprep.subr.mxu0 0.0
  %1899 = vmatpush1.msra.mxu0 0.0
  %1900 = vmatprep.subr.mxu0 0.0
  %1901 = vmatpush1.msra.mxu0 0.0
  %1902 = vmatprep.subr.mxu0 0.0
  %1903 = vmatpush1.msra.mxu0 0.0
  %1904 = vmatprep.subr.mxu0 0.0
  %1905 = vmatpush1.msra.mxu0 0.0
  %1906 = vmatprep.subr.mxu0 0.0
  %1907 = vmatpush1.msra.mxu0 0.0
  %1908 = vmatprep.subr.mxu0 0.0
  %1909 = vmatpush1.msra.mxu0 0.0
  %1910 = vmatprep.subr.mxu0 0.0
  %1911 = vmatpush1.msra.mxu0 0.0
  %1912 = vmatprep.subr.mxu0 0.0
  %1913 = vmatpush1.msra.mxu0 0.0
  %1914 = vmatprep.subr.mxu0 0.0
  %1915 = vmatpush1.msra.mxu0 0.0
  %1916 = vmatprep.subr.mxu0 0.0
  %1917 = vmatpush1.msra.mxu0 0.0
  %1918 = vmatprep.subr.mxu0 0.0
  %1919 = vmatpush1.msra.mxu0 0.0
  %1920 = vmatprep.subr.mxu0 0.0
  %1921 = vmatpush1.msra.mxu0 0.0
  %1922 = vmatprep.mubr.f32.mxu0 0.0
  %1923 = vmatmul.mubr.f32.gmra.mrb[0].mxu0 %v503
  %v1924 = vpop.f32.mrb[0].mxu0
  %v1925 = vadd.f32 0.0, %v1924
  %v1926 = vpop.f32.mrb[0].mxu0
  %1927 = vmatprep.mubr.f32.mxu0 0.0
  %1928 = vmatmul.mubr.f32.gmra.mrb[0].mxu0 %v506
  %v1929 = vpop.f32.mrb[0].mxu0
  %v1930 = vadd.f32 0.0, %v1929
  %v1931 = vpop.f32.mrb[0].mxu0
  %1932 = vdwg.mxu0
  %1933 = vmatprep.subr.mxu0 0.0
  %1934 = vmatpush1.msra.mxu0 %v60
  %1935 = vmatprep.subr.mxu0 0.0
  %1936 = vmatpush1.msra.mxu0 %v61
  %1937 = vmatprep.subr.mxu0 0.0
  %1938 = vmatpush1.msra.mxu0 %v62
  %1939 = vmatprep.subr.mxu0 0.0
  %1940 = vmatpush1.msra.mxu0 %v63
  %1941 = vmatprep.subr.mxu0 0.0
  %1942 = vmatpush1.msra.mxu0 0.0
  %1943 = vmatprep.subr.mxu0 0.0
  %1944 = vmatpush1.msra.mxu0 0.0
  %1945 = vmatprep.subr.mxu0 0.0
  %1946 = vmatpush1.msra.mxu0 0.0
  %1947 = vmatprep.subr.mxu0 0.0
  %1948 = vmatpush1.msra.mxu0 0.0
  %1949 = vmatprep.subr.mxu0 0.0
  %1950 = vmatpush1.msra.mxu0 0.0
  %1951 = vmatprep.subr.mxu0 0.0
  %1952 = vmatpush1.msra.mxu0 0.0
  %1953 = vmatprep.subr.mxu0 0.0
  %1954 = vmatpush1.msra.mxu0 0.0
  %1955 = vmatprep.subr.mxu0 0.0
  %1956 = vmatpush1.msra.mxu0 0.0
  %1957 = vmatprep.subr.mxu0 0.0
  %1958 = vmatpush1.msra.mxu0 0.0
  %1959 = vmatprep.subr.mxu0 0.0
  %1960 = vmatpush1.msra.mxu0 0.0
  %1961 = vmatprep.subr.mxu0 0.0
  %1962 = vmatpush1.msra.mxu0 0.0
  %1963 = vmatprep.subr.mxu0 0.0
  %1964 = vmatpush1.msra.mxu0 0.0
  %1965 = vmatprep.subr.mxu0 0.0
  %1966 = vmatpush1.msra.mxu0 0.0
  %1967 = vmatprep.subr.mxu0 0.0
  %1968 = vmatpush1.msra.mxu0 0.0
  %1969 = vmatprep.subr.mxu0 0.0
  %1970 = vmatpush1.msra.mxu0 0.0
  %1971 = vmatprep.subr.mxu0 0.0
  %1972 = vmatpush1.msra.mxu0 0.0
  %1973 = vmatprep.subr.mxu0 0.0
  %1974 = vmatpush1.msra.mxu0 0.0
  %1975 = vmatprep.subr.mxu0 0.0
  %1976 = vmatpush1.msra.mxu0 0.0
  %1977 = vmatprep.subr.mxu0 0.0
  %1978 = vmatpush1.msra.mxu0 0.0
  %1979 = vmatprep.subr.mxu0 0.0
  %1980 = vmatpush1.msra.mxu0 0.0
  %1981 = vmatprep.subr.mxu0 0.0
  %1982 = vmatpush1.msra.mxu0 0.0
  %1983 = vmatprep.subr.mxu0 0.0
  %1984 = vmatpush1.msra.mxu0 0.0
  %1985 = vmatprep.subr.mxu0 0.0
  %1986 = vmatpush1.msra.mxu0 0.0
  %1987 = vmatprep.subr.mxu0 0.0
  %1988 = vmatpush1.msra.mxu0 0.0
  %1989 = vmatprep.subr.mxu0 0.0
  %1990 = vmatpush1.msra.mxu0 0.0
  %1991 = vmatprep.subr.mxu0 0.0
  %1992 = vmatpush1.msra.mxu0 0.0
  %1993 = vmatprep.subr.mxu0 0.0
  %1994 = vmatpush1.msra.mxu0 0.0
  %1995 = vmatprep.subr.mxu0 0.0
  %1996 = vmatpush1.msra.mxu0 0.0
  %1997 = vmatprep.mubr.f32.mxu0 0.0
  %1998 = vmatmul.mubr.f32.gmra.mrb[0].mxu0 %v98
  %v1999 = vpop.f32.mrb[0].mxu0
  %v2000 = vadd.f32 0.0, %v1999
  %v2001 = vpop.f32.mrb[0].mxu0
  %2002 = vmatprep.mubr.f32.mxu0 0.0
  %2003 = vmatmul.mubr.f32.gmra.mrb[0].mxu0 %v101
  %v2004 = vpop.f32.mrb[0].mxu0
  %v2005 = vadd.f32 0.0, %v2004
  %v2006 = vpop.f32.mrb[0].mxu0
  %2007 = vdwg.mxu0
  %2008 = vmatprep.subr.mxu0 0.0
  %2009 = vmatpush1.msra.mxu0 %v60
  %2010 = vmatprep.subr.mxu0 0.0
  %2011 = vmatpush1.msra.mxu0 %v61
  %2012 = vmatprep.subr.mxu0 0.0
  %2013 = vmatpush1.msra.mxu0 %v62
  %2014 = vmatprep.subr.mxu0 0.0
  %2015 = vmatpush1.msra.mxu0 %v63
  %2016 = vmatprep.subr.mxu0 0.0
  %2017 = vmatpush1.msra.mxu0 0.0
  %2018 = vmatprep.subr.mxu0 0.0
  %2019 = vmatpush1.msra.mxu0 0.0
  %2020 = vmatprep.subr.mxu0 0.0
  %2021 = vmatpush1.msra.mxu0 0.0
  %2022 = vmatprep.subr.mxu0 0.0
  %2023 = vmatpush1.msra.mxu0 0.0
  %2024 = vmatprep.subr.mxu0 0.0
  %2025 = vmatpush1.msra.mxu0 0.0
  %2026 = vmatprep.subr.mxu0 0.0
  %2027 = vmatpush1.msra.mxu0 0.0
  %2028 = vmatprep.subr.mxu0 0.0
  %2029 = vmatpush1.msra.mxu0 0.0
  %2030 = vmatprep.subr.mxu0 0.0
  %2031 = vmatpush1.msra.mxu0 0.0
  %2032 = vmatprep.subr.mxu0 0.0
  %2033 = vmatpush1.msra.mxu0 0.0
  %2034 = vmatprep.subr.mxu0 0.0
  %2035 = vmatpush1.msra.mxu0 0.0
  %2036 = vmatprep.subr.mxu0 0.0
  %2037 = vmatpush1.msra.mxu0 0.0
  %2038 = vmatprep.subr.mxu0 0.0
  %2039 = vmatpush1.msra.mxu0 0.0
  %2040 = vmatprep.subr.mxu0 0.0
  %2041 = vmatpush1.msra.mxu0 0.0
  %2042 = vmatprep.subr.mxu0 0.0
  %2043 = vmatpush1.msra.mxu0 0.0
  %2044 = vmatprep.subr.mxu0 0.0
  %2045 = vmatpush1.msra.mxu0 0.0
  %2046 = vmatprep.subr.mxu0 0.0
  %2047 = vmatpush1.msra.mxu0 0.0
  %2048 = vmatprep.subr.mxu0 0.0
  %2049 = vmatpush1.msra.mxu0 0.0
  %2050 = vmatprep.subr.mxu0 0.0
  %2051 = vmatpush1.msra.mxu0 0.0
  %2052 = vmatprep.subr.mxu0 0.0
  %2053 = vmatpush1.msra.mxu0 0.0
  %2054 = vmatprep.subr.mxu0 0.0
  %2055 = vmatpush1.msra.mxu0 0.0
  %2056 = vmatprep.subr.mxu0 0.0
  %2057 = vmatpush1.msra.mxu0 0.0
  %2058 = vmatprep.subr.mxu0 0.0
  %2059 = vmatpush1.msra.mxu0 0.0
  %2060 = vmatprep.subr.mxu0 0.0
  %2061 = vmatpush1.msra.mxu0 0.0
  %2062 = vmatprep.subr.mxu0 0.0
  %2063 = vmatpush1.msra.mxu0 0.0
  %2064 = vmatprep.subr.mxu0 0.0
  %2065 = vmatpush1.msra.mxu0 0.0
  %2066 = vmatprep.subr.mxu0 0.0
  %2067 = vmatpush1.msra.mxu0 0.0
  %2068 = vmatprep.subr.mxu0 0.0
  %2069 = vmatpush1.msra.mxu0 0.0
  %2070 = vmatprep.subr.mxu0 0.0
  %2071 = vmatpush1.msra.mxu0 0.0
  %2072 = vmatprep.mubr.f32.mxu0 0.0
  %2073 = vmatmul.mubr.f32.gmra.mrb[0].mxu0 %v179
  %v2074 = vpop.f32.mrb[0].mxu0
  %v2075 = vadd.f32 0.0, %v2074
  %v2076 = vpop.f32.mrb[0].mxu0
  %2077 = vmatprep.mubr.f32.mxu0 0.0
  %2078 = vmatmul.mubr.f32.gmra.mrb[0].mxu0 %v182
  %v2079 = vpop.f32.mrb[0].mxu0
  %v2080 = vadd.f32 0.0, %v2079
  %v2081 = vpop.f32.mrb[0].mxu0
  %2082 = vdwg.mxu0
  %2083 = vmatprep.subr.mxu0 0.0
  %2084 = vmatpush1.msra.mxu0 %v60
  %2085 = vmatprep.subr.mxu0 0.0
  %2086 = vmatpush1.msra.mxu0 %v61
  %2087 = vmatprep.subr.mxu0 0.0
  %2088 = vmatpush1.msra.mxu0 %v62
  %2089 = vmatprep.subr.mxu0 0.0
  %2090 = vmatpush1.msra.mxu0 %v63
  %2091 = vmatprep.subr.mxu0 0.0
  %2092 = vmatpush1.msra.mxu0 0.0
  %2093 = vmatprep.subr.mxu0 0.0
  %2094 = vmatpush1.msra.mxu0 0.0
  %2095 = vmatprep.subr.mxu0 0.0
  %2096 = vmatpush1.msra.mxu0 0.0
  %2097 = vmatprep.subr.mxu0 0.0
  %2098 = vmatpush1.msra.mxu0 0.0
  %2099 = vmatprep.subr.mxu0 0.0
  %2100 = vmatpush1.msra.mxu0 0.0
  %2101 = vmatprep.subr.mxu0 0.0
  %2102 = vmatpush1.msra.mxu0 0.0
  %2103 = vmatprep.subr.mxu0 0.0
  %2104 = vmatpush1.msra.mxu0 0.0
  %2105 = vmatprep.subr.mxu0 0.0
  %2106 = vmatpush1.msra.mxu0 0.0
  %2107 = vmatprep.subr.mxu0 0.0
  %2108 = vmatpush1.msra.mxu0 0.0
  %2109 = vmatprep.subr.mxu0 0.0
  %2110 = vmatpush1.msra.mxu0 0.0
  %2111 = vmatprep.subr.mxu0 0.0
  %2112 = vmatpush1.msra.mxu0 0.0
  %2113 = vmatprep.subr.mxu0 0.0
  %2114 = vmatpush1.msra.mxu0 0.0
  %2115 = vmatprep.subr.mxu0 0.0
  %2116 = vmatpush1.msra.mxu0 0.0
  %2117 = vmatprep.subr.mxu0 0.0
  %2118 = vmatpush1.msra.mxu0 0.0
  %2119 = vmatprep.subr.mxu0 0.0
  %2120 = vmatpush1.msra.mxu0 0.0
  %2121 = vmatprep.subr.mxu0 0.0
  %2122 = vmatpush1.msra.mxu0 0.0
  %2123 = vmatprep.subr.mxu0 0.0
  %2124 = vmatpush1.msra.mxu0 0.0
  %2125 = vmatprep.subr.mxu0 0.0
  %2126 = vmatpush1.msra.mxu0 0.0
  %2127 = vmatprep.subr.mxu0 0.0
  %2128 = vmatpush1.msra.mxu0 0.0
  %2129 = vmatprep.subr.mxu0 0.0
  %2130 = vmatpush1.msra.mxu0 0.0
  %2131 = vmatprep.subr.mxu0 0.0
  %2132 = vmatpush1.msra.mxu0 0.0
  %2133 = vmatprep.subr.mxu0 0.0
  %2134 = vmatpush1.msra.mxu0 0.0
  %2135 = vmatprep.subr.mxu0 0.0
  %2136 = vmatpush1.msra.mxu0 0.0
  %2137 = vmatprep.subr.mxu0 0.0
  %2138 = vmatpush1.msra.mxu0 0.0
  %2139 = vmatprep.subr.mxu0 0.0
  %2140 = vmatpush1.msra.mxu0 0.0
  %2141 = vmatprep.subr.mxu0 0.0
  %2142 = vmatpush1.msra.mxu0 0.0
  %2143 = vmatprep.subr.mxu0 0.0
  %2144 = vmatpush1.msra.mxu0 0.0
  %2145 = vmatprep.subr.mxu0 0.0
  %2146 = vmatpush1.msra.mxu0 0.0
  %2147 = vmatprep.mubr.f32.mxu0 0.0
  %2148 = vmatmul.mubr.f32.gmra.mrb[0].mxu0 %v260
  %v2149 = vpop.f32.mrb[0].mxu0
  %v2150 = vadd.f32 0.0, %v2149
  %v2151 = vpop.f32.mrb[0].mxu0
  %2152 = vmatprep.mubr.f32.mxu0 0.0
  %2153 = vmatmul.mubr.f32.gmra.mrb[0].mxu0 %v263
  %v2154 = vpop.f32.mrb[0].mxu0
  %v2155 = vadd.f32 0.0, %v2154
  %v2156 = vpop.f32.mrb[0].mxu0
  %2157 = vdwg.mxu0
  %2158 = vmatprep.subr.mxu0 0.0
  %2159 = vmatpush1.msra.mxu0 %v60
  %2160 = vmatprep.subr.mxu0 0.0
  %2161 = vmatpush1.msra.mxu0 %v61
  %2162 = vmatprep.subr.mxu0 0.0
  %2163 = vmatpush1.msra.mxu0 %v62
  %2164 = vmatprep.subr.mxu0 0.0
  %2165 = vmatpush1.msra.mxu0 %v63
  %2166 = vmatprep.subr.mxu0 0.0
  %2167 = vmatpush1.msra.mxu0 0.0
  %2168 = vmatprep.subr.mxu0 0.0
  %2169 = vmatpush1.msra.mxu0 0.0
  %2170 = vmatprep.subr.mxu0 0.0
  %2171 = vmatpush1.msra.mxu0 0.0
  %2172 = vmatprep.subr.mxu0 0.0
  %2173 = vmatpush1.msra.mxu0 0.0
  %2174 = vmatprep.subr.mxu0 0.0
  %2175 = vmatpush1.msra.mxu0 0.0
  %2176 = vmatprep.subr.mxu0 0.0
  %2177 = vmatpush1.msra.mxu0 0.0
  %2178 = vmatprep.subr.mxu0 0.0
  %2179 = vmatpush1.msra.mxu0 0.0
  %2180 = vmatprep.subr.mxu0 0.0
  %2181 = vmatpush1.msra.mxu0 0.0
  %2182 = vmatprep.subr.mxu0 0.0
  %2183 = vmatpush1.msra.mxu0 0.0
  %2184 = vmatprep.subr.mxu0 0.0
  %2185 = vmatpush1.msra.mxu0 0.0
  %2186 = vmatprep.subr.mxu0 0.0
  %2187 = vmatpush1.msra.mxu0 0.0
  %2188 = vmatprep.subr.mxu0 0.0
  %2189 = vmatpush1.msra.mxu0 0.0
  %2190 = vmatprep.subr.mxu0 0.0
  %2191 = vmatpush1.msra.mxu0 0.0
  %2192 = vmatprep.subr.mxu0 0.0
  %2193 = vmatpush1.msra.mxu0 0.0
  %2194 = vmatprep.subr.mxu0 0.0
  %2195 = vmatpush1.msra.mxu0 0.0
  %2196 = vmatprep.subr.mxu0 0.0
  %2197 = vmatpush1.msra.mxu0 0.0
  %2198 = vmatprep.subr.mxu0 0.0
  %2199 = vmatpush1.msra.mxu0 0.0
  %2200 = vmatprep.subr.mxu0 0.0
  %2201 = vmatpush1.msra.mxu0 0.0
  %2202 = vmatprep.subr.mxu0 0.0
  %2203 = vmatpush1.msra.mxu0 0.0
  %2204 = vmatprep.subr.mxu0 0.0
  %2205 = vmatpush1.msra.mxu0 0.0
  %2206 = vmatprep.subr.mxu0 0.0
  %2207 = vmatpush1.msra.mxu0 0.0
  %2208 = vmatprep.subr.mxu0 0.0
  %2209 = vmatpush1.msra.mxu0 0.0
  %2210 = vmatprep.subr.mxu0 0.0
  %2211 = vmatpush1.msra.mxu0 0.0
  %2212 = vmatprep.subr.mxu0 0.0
  %2213 = vmatpush1.msra.mxu0 0.0
  %2214 = vmatprep.subr.mxu0 0.0
  %2215 = vmatpush1.msra.mxu0 0.0
  %2216 = vmatprep.subr.mxu0 0.0
  %2217 = vmatpush1.msra.mxu0 0.0
  %2218 = vmatprep.subr.mxu0 0.0
  %2219 = vmatpush1.msra.mxu0 0.0
  %2220 = vmatprep.subr.mxu0 0.0
  %2221 = vmatpush1.msra.mxu0 0.0
  %2222 = vmatprep.mubr.f32.mxu0 0.0
  %2223 = vmatmul.mubr.f32.gmra.mrb[0].mxu0 %v341
  %v2224 = vpop.f32.mrb[0].mxu0
  %v2225 = vadd.f32 0.0, %v2224
  %v2226 = vpop.f32.mrb[0].mxu0
  %2227 = vmatprep.mubr.f32.mxu0 0.0
  %2228 = vmatmul.mubr.f32.gmra.mrb[0].mxu0 %v344
  %v2229 = vpop.f32.mrb[0].mxu0
  %v2230 = vadd.f32 0.0, %v2229
  %v2231 = vpop.f32.mrb[0].mxu0
  %2232 = vdwg.mxu0
  %2233 = vmatprep.subr.mxu0 0.0
  %2234 = vmatpush1.msra.mxu0 %v60
  %2235 = vmatprep.subr.mxu0 0.0
  %2236 = vmatpush1.msra.mxu0 %v61
  %2237 = vmatprep.subr.mxu0 0.0
  %2238 = vmatpush1.msra.mxu0 %v62
  %2239 = vmatprep.subr.mxu0 0.0
  %2240 = vmatpush1.msra.mxu0 %v63
  %2241 = vmatprep.subr.mxu0 0.0
  %2242 = vmatpush1.msra.mxu0 0.0
  %2243 = vmatprep.subr.mxu0 0.0
  %2244 = vmatpush1.msra.mxu0 0.0
  %2245 = vmatprep.subr.mxu0 0.0
  %2246 = vmatpush1.msra.mxu0 0.0
  %2247 = vmatprep.subr.mxu0 0.0
  %2248 = vmatpush1.msra.mxu0 0.0
  %2249 = vmatprep.subr.mxu0 0.0
  %2250 = vmatpush1.msra.mxu0 0.0
  %2251 = vmatprep.subr.mxu0 0.0
  %2252 = vmatpush1.msra.mxu0 0.0
  %2253 = vmatprep.subr.mxu0 0.0
  %2254 = vmatpush1.msra.mxu0 0.0
  %2255 = vmatprep.subr.mxu0 0.0
  %2256 = vmatpush1.msra.mxu0 0.0
  %2257 = vmatprep.subr.mxu0 0.0
  %2258 = vmatpush1.msra.mxu0 0.0
  %2259 = vmatprep.subr.mxu0 0.0
  %2260 = vmatpush1.msra.mxu0 0.0
  %2261 = vmatprep.subr.mxu0 0.0
  %2262 = vmatpush1.msra.mxu0 0.0
  %2263 = vmatprep.subr.mxu0 0.0
  %2264 = vmatpush1.msra.mxu0 0.0
  %2265 = vmatprep.subr.mxu0 0.0
  %2266 = vmatpush1.msra.mxu0 0.0
  %2267 = vmatprep.subr.mxu0 0.0
  %2268 = vmatpush1.msra.mxu0 0.0
  %2269 = vmatprep.subr.mxu0 0.0
  %2270 = vmatpush1.msra.mxu0 0.0
  %2271 = vmatprep.subr.mxu0 0.0
  %2272 = vmatpush1.msra.mxu0 0.0
  %2273 = vmatprep.subr.mxu0 0.0
  %2274 = vmatpush1.msra.mxu0 0.0
  %2275 = vmatprep.subr.mxu0 0.0
  %2276 = vmatpush1.msra.mxu0 0.0
  %2277 = vmatprep.subr.mxu0 0.0
  %2278 = vmatpush1.msra.mxu0 0.0
  %2279 = vmatprep.subr.mxu0 0.0
  %2280 = vmatpush1.msra.mxu0 0.0
  %2281 = vmatprep.subr.mxu0 0.0
  %2282 = vmatpush1.msra.mxu0 0.0
  %2283 = vmatprep.subr.mxu0 0.0
  %2284 = vmatpush1.msra.mxu0 0.0
  %2285 = vmatprep.subr.mxu0 0.0
  %2286 = vmatpush1.msra.mxu0 0.0
  %2287 = vmatprep.subr.mxu0 0.0
  %2288 = vmatpush1.msra.mxu0 0.0
  %2289 = vmatprep.subr.mxu0 0.0
  %2290 = vmatpush1.msra.mxu0 0.0
  %2291 = vmatprep.subr.mxu0 0.0
  %2292 = vmatpush1.msra.mxu0 0.0
  %2293 = vmatprep.subr.mxu0 0.0
  %2294 = vmatpush1.msra.mxu0 0.0
  %2295 = vmatprep.subr.mxu0 0.0
  %2296 = vmatpush1.msra.mxu0 0.0
  %2297 = vmatprep.mubr.f32.mxu0 0.0
  %2298 = vmatmul.mubr.f32.gmra.mrb[0].mxu0 %v422
  %v2299 = vpop.f32.mrb[0].mxu0
  %v2300 = vadd.f32 0.0, %v2299
  %v2301 = vpop.f32.mrb[0].mxu0
  %2302 = vmatprep.mubr.f32.mxu0 0.0
  %2303 = vmatmul.mubr.f32.gmra.mrb[0].mxu0 %v425
  %v2304 = vpop.f32.mrb[0].mxu0
  %v2305 = vadd.f32 0.0, %v2304
  %v2306 = vpop.f32.mrb[0].mxu0
  %2307 = vdwg.mxu0
  %2308 = vmatprep.subr.mxu0 0.0
  %2309 = vmatpush1.msra.mxu0 %v60
  %2310 = vmatprep.subr.mxu0 0.0
  %2311 = vmatpush1.msra.mxu0 %v61
  %2312 = vmatprep.subr.mxu0 0.0
  %2313 = vmatpush1.msra.mxu0 %v62
  %2314 = vmatprep.subr.mxu0 0.0
  %2315 = vmatpush1.msra.mxu0 %v63
  %2316 = vmatprep.subr.mxu0 0.0
  %2317 = vmatpush1.msra.mxu0 0.0
  %2318 = vmatprep.subr.mxu0 0.0
  %2319 = vmatpush1.msra.mxu0 0.0
  %2320 = vmatprep.subr.mxu0 0.0
  %2321 = vmatpush1.msra.mxu0 0.0
  %2322 = vmatprep.subr.mxu0 0.0
  %2323 = vmatpush1.msra.mxu0 0.0
  %2324 = vmatprep.subr.mxu0 0.0
  %2325 = vmatpush1.msra.mxu0 0.0
  %2326 = vmatprep.subr.mxu0 0.0
  %2327 = vmatpush1.msra.mxu0 0.0
  %2328 = vmatprep.subr.mxu0 0.0
  %2329 = vmatpush1.msra.mxu0 0.0
  %2330 = vmatprep.subr.mxu0 0.0
  %2331 = vmatpush1.msra.mxu0 0.0
  %2332 = vmatprep.subr.mxu0 0.0
  %2333 = vmatpush1.msra.mxu0 0.0
  %2334 = vmatprep.subr.mxu0 0.0
  %2335 = vmatpush1.msra.mxu0 0.0
  %2336 = vmatprep.subr.mxu0 0.0
  %2337 = vmatpush1.msra.mxu0 0.0
  %2338 = vmatprep.subr.mxu0 0.0
  %2339 = vmatpush1.msra.mxu0 0.0
  %2340 = vmatprep.subr.mxu0 0.0
  %2341 = vmatpush1.msra.mxu0 0.0
  %2342 = vmatprep.subr.mxu0 0.0
  %2343 = vmatpush1.msra.mxu0 0.0
  %2344 = vmatprep.subr.mxu0 0.0
  %2345 = vmatpush1.msra.mxu0 0.0
  %2346 = vmatprep.subr.mxu0 0.0
  %2347 = vmatpush1.msra.mxu0 0.0
  %2348 = vmatprep.subr.mxu0 0.0
  %2349 = vmatpush1.msra.mxu0 0.0
  %2350 = vmatprep.subr.mxu0 0.0
  %2351 = vmatpush1.msra.mxu0 0.0
  %2352 = vmatprep.subr.mxu0 0.0
  %2353 = vmatpush1.msra.mxu0 0.0
  %2354 = vmatprep.subr.mxu0 0.0
  %2355 = vmatpush1.msra.mxu0 0.0
  %2356 = vmatprep.subr.mxu0 0.0
  %2357 = vmatpush1.msra.mxu0 0.0
  %2358 = vmatprep.subr.mxu0 0.0
  %2359 = vmatpush1.msra.mxu0 0.0
  %2360 = vmatprep.subr.mxu0 0.0
  %2361 = vmatpush1.msra.mxu0 0.0
  %2362 = vmatprep.subr.mxu0 0.0
  %2363 = vmatpush1.msra.mxu0 0.0
  %2364 = vmatprep.subr.mxu0 0.0
  %2365 = vmatpush1.msra.mxu0 0.0
  %2366 = vmatprep.subr.mxu0 0.0
  %2367 = vmatpush1.msra.mxu0 0.0
  %2368 = vmatprep.subr.mxu0 0.0
  %2369 = vmatpush1.msra.mxu0 0.0
  %2370 = vmatprep.subr.mxu0 0.0
  %2371 = vmatpush1.msra.mxu0 0.0
  %2372 = vmatprep.mubr.f32.mxu0 0.0
  %2373 = vmatmul.mubr.f32.gmra.mrb[0].mxu0 %v503
  %v2374 = vpop.f32.mrb[0].mxu0
  %v2375 = vadd.f32 0.0, %v2374
  %v2376 = vpop.f32.mrb[0].mxu0
  %2377 = vmatprep.mubr.f32.mxu0 0.0
  %2378 = vmatmul.mubr.f32.gmra.mrb[0].mxu0 %v506
  %v2379 = vpop.f32.mrb[0].mxu0
  %v2380 = vadd.f32 0.0, %v2379
  %v2381 = vpop.f32.mrb[0].mxu0
  %2382 = vdwg.mxu0
  %2383 = vmatprep.subr.mxu0 0.0
  %2384 = vmatpush1.msra.mxu0 %v64
  %2385 = vmatprep.subr.mxu0 0.0
  %2386 = vmatpush1.msra.mxu0 %v65
  %2387 = vmatprep.subr.mxu0 0.0
  %2388 = vmatpush1.msra.mxu0 %v66
  %2389 = vmatprep.subr.mxu0 0.0
  %2390 = vmatpush1.msra.mxu0 %v67
  %2391 = vmatprep.subr.mxu0 0.0
  %2392 = vmatpush1.msra.mxu0 0.0
  %2393 = vmatprep.subr.mxu0 0.0
  %2394 = vmatpush1.msra.mxu0 0.0
  %2395 = vmatprep.subr.mxu0 0.0
  %2396 = vmatpush1.msra.mxu0 0.0
  %2397 = vmatprep.subr.mxu0 0.0
  %2398 = vmatpush1.msra.mxu0 0.0
  %2399 = vmatprep.subr.mxu0 0.0
  %2400 = vmatpush1.msra.mxu0 0.0
  %2401 = vmatprep.subr.mxu0 0.0
  %2402 = vmatpush1.msra.mxu0 0.0
  %2403 = vmatprep.subr.mxu0 0.0
  %2404 = vmatpush1.msra.mxu0 0.0
  %2405 = vmatprep.subr.mxu0 0.0
  %2406 = vmatpush1.msra.mxu0 0.0
  %2407 = vmatprep.subr.mxu0 0.0
  %2408 = vmatpush1.msra.mxu0 0.0
  %2409 = vmatprep.subr.mxu0 0.0
  %2410 = vmatpush1.msra.mxu0 0.0
  %2411 = vmatprep.subr.mxu0 0.0
  %2412 = vmatpush1.msra.mxu0 0.0
  %2413 = vmatprep.subr.mxu0 0.0
  %2414 = vmatpush1.msra.mxu0 0.0
  %2415 = vmatprep.subr.mxu0 0.0
  %2416 = vmatpush1.msra.mxu0 0.0
  %2417 = vmatprep.subr.mxu0 0.0
  %2418 = vmatpush1.msra.mxu0 0.0
  %2419 = vmatprep.subr.mxu0 0.0
  %2420 = vmatpush1.msra.mxu0 0.0
  %2421 = vmatprep.subr.mxu0 0.0
  %2422 = vmatpush1.msra.mxu0 0.0
  %2423 = vmatprep.subr.mxu0 0.0
  %2424 = vmatpush1.msra.mxu0 0.0
  %2425 = vmatprep.subr.mxu0 0.0
  %2426 = vmatpush1.msra.mxu0 0.0
  %2427 = vmatprep.subr.mxu0 0.0
  %2428 = vmatpush1.msra.mxu0 0.0
  %2429 = vmatprep.subr.mxu0 0.0
  %2430 = vmatpush1.msra.mxu0 0.0
  %2431 = vmatprep.subr.mxu0 0.0
  %2432 = vmatpush1.msra.mxu0 0.0
  %2433 = vmatprep.subr.mxu0 0.0
  %2434 = vmatpush1.msra.mxu0 0.0
  %2435 = vmatprep.subr.mxu0 0.0
  %2436 = vmatpush1.msra.mxu0 0.0
  %2437 = vmatprep.subr.mxu0 0.0
  %2438 = vmatpush1.msra.mxu0 0.0
  %2439 = vmatprep.subr.mxu0 0.0
  %2440 = vmatpush1.msra.mxu0 0.0
  %2441 = vmatprep.subr.mxu0 0.0
  %2442 = vmatpush1.msra.mxu0 0.0
  %2443 = vmatprep.subr.mxu0 0.0
  %2444 = vmatpush1.msra.mxu0 0.0
  %2445 = vmatprep.subr.mxu0 0.0
  %2446 = vmatpush1.msra.mxu0 0.0
  %2447 = vmatprep.mubr.f32.mxu0 0.0
  %2448 = vmatmul.mubr.f32.gmra.mrb[0].mxu0 %v98
  %v2449 = vpop.f32.mrb[0].mxu0
  %v2450 = vadd.f32 0.0, %v2449
  %v2451 = vpop.f32.mrb[0].mxu0
  %2452 = vmatprep.mubr.f32.mxu0 0.0
  %2453 = vmatmul.mubr.f32.gmra.mrb[0].mxu0 %v101
  %v2454 = vpop.f32.mrb[0].mxu0
  %v2455 = vadd.f32 0.0, %v2454
  %v2456 = vpop.f32.mrb[0].mxu0
  %2457 = vdwg.mxu0
  %2458 = vmatprep.subr.mxu0 0.0
  %2459 = vmatpush1.msra.mxu0 %v64
  %2460 = vmatprep.subr.mxu0 0.0
  %2461 = vmatpush1.msra.mxu0 %v65
  %2462 = vmatprep.subr.mxu0 0.0
  %2463 = vmatpush1.msra.mxu0 %v66
  %2464 = vmatprep.subr.mxu0 0.0
  %2465 = vmatpush1.msra.mxu0 %v67
  %2466 = vmatprep.subr.mxu0 0.0
  %2467 = vmatpush1.msra.mxu0 0.0
  %2468 = vmatprep.subr.mxu0 0.0
  %2469 = vmatpush1.msra.mxu0 0.0
  %2470 = vmatprep.subr.mxu0 0.0
  %2471 = vmatpush1.msra.mxu0 0.0
  %2472 = vmatprep.subr.mxu0 0.0
  %2473 = vmatpush1.msra.mxu0 0.0
  %2474 = vmatprep.subr.mxu0 0.0
  %2475 = vmatpush1.msra.mxu0 0.0
  %2476 = vmatprep.subr.mxu0 0.0
  %2477 = vmatpush1.msra.mxu0 0.0
  %2478 = vmatprep.subr.mxu0 0.0
  %2479 = vmatpush1.msra.mxu0 0.0
  %2480 = vmatprep.subr.mxu0 0.0
  %2481 = vmatpush1.msra.mxu0 0.0
  %2482 = vmatprep.subr.mxu0 0.0
  %2483 = vmatpush1.msra.mxu0 0.0
  %2484 = vmatprep.subr.mxu0 0.0
  %2485 = vmatpush1.msra.mxu0 0.0
  %2486 = vmatprep.subr.mxu0 0.0
  %2487 = vmatpush1.msra.mxu0 0.0
  %2488 = vmatprep.subr.mxu0 0.0
  %2489 = vmatpush1.msra.mxu0 0.0
  %2490 = vmatprep.subr.mxu0 0.0
  %2491 = vmatpush1.msra.mxu0 0.0
  %2492 = vmatprep.subr.mxu0 0.0
  %2493 = vmatpush1.msra.mxu0 0.0
  %2494 = vmatprep.subr.mxu0 0.0
  %2495 = vmatpush1.msra.mxu0 0.0
  %2496 = vmatprep.subr.mxu0 0.0
  %2497 = vmatpush1.msra.mxu0 0.0
  %2498 = vmatprep.subr.mxu0 0.0
  %2499 = vmatpush1.msra.mxu0 0.0
  %2500 = vmatprep.subr.mxu0 0.0
  %2501 = vmatpush1.msra.mxu0 0.0
  %2502 = vmatprep.subr.mxu0 0.0
  %2503 = vmatpush1.msra.mxu0 0.0
  %2504 = vmatprep.subr.mxu0 0.0
  %2505 = vmatpush1.msra.mxu0 0.0
  %2506 = vmatprep.subr.mxu0 0.0
  %2507 = vmatpush1.msra.mxu0 0.0
  %2508 = vmatprep.subr.mxu0 0.0
  %2509 = vmatpush1.msra.mxu0 0.0
  %2510 = vmatprep.subr.mxu0 0.0
  %2511 = vmatpush1.msra.mxu0 0.0
  %2512 = vmatprep.subr.mxu0 0.0
  %2513 = vmatpush1.msra.mxu0 0.0
  %2514 = vmatprep.subr.mxu0 0.0
  %2515 = vmatpush1.msra.mxu0 0.0
  %2516 = vmatprep.subr.mxu0 0.0
  %2517 = vmatpush1.msra.mxu0 0.0
  %2518 = vmatprep.subr.mxu0 0.0
  %2519 = vmatpush1.msra.mxu0 0.0
  %2520 = vmatprep.subr.mxu0 0.0
  %2521 = vmatpush1.msra.mxu0 0.0
  %2522 = vmatprep.mubr.f32.mxu0 0.0
  %2523 = vmatmul.mubr.f32.gmra.mrb[0].mxu0 %v179
  %v2524 = vpop.f32.mrb[0].mxu0
  %v2525 = vadd.f32 0.0, %v2524
  %v2526 = vpop.f32.mrb[0].mxu0
  %2527 = vmatprep.mubr.f32.mxu0 0.0
  %2528 = vmatmul.mubr.f32.gmra.mrb[0].mxu0 %v182
  %v2529 = vpop.f32.mrb[0].mxu0
  %v2530 = vadd.f32 0.0, %v2529
  %v2531 = vpop.f32.mrb[0].mxu0
  %2532 = vdwg.mxu0
  %2533 = vmatprep.subr.mxu0 0.0
  %2534 = vmatpush1.msra.mxu0 %v64
  %2535 = vmatprep.subr.mxu0 0.0
  %2536 = vmatpush1.msra.mxu0 %v65
  %2537 = vmatprep.subr.mxu0 0.0
  %2538 = vmatpush1.msra.mxu0 %v66
  %2539 = vmatprep.subr.mxu0 0.0
  %2540 = vmatpush1.msra.mxu0 %v67
  %2541 = vmatprep.subr.mxu0 0.0
  %2542 = vmatpush1.msra.mxu0 0.0
  %2543 = vmatprep.subr.mxu0 0.0
  %2544 = vmatpush1.msra.mxu0 0.0
  %2545 = vmatprep.subr.mxu0 0.0
  %2546 = vmatpush1.msra.mxu0 0.0
  %2547 = vmatprep.subr.mxu0 0.0
  %2548 = vmatpush1.msra.mxu0 0.0
  %2549 = vmatprep.subr.mxu0 0.0
  %2550 = vmatpush1.msra.mxu0 0.0
  %2551 = vmatprep.subr.mxu0 0.0
  %2552 = vmatpush1.msra.mxu0 0.0
  %2553 = vmatprep.subr.mxu0 0.0
  %2554 = vmatpush1.msra.mxu0 0.0
  %2555 = vmatprep.subr.mxu0 0.0
  %2556 = vmatpush1.msra.mxu0 0.0
  %2557 = vmatprep.subr.mxu0 0.0
  %2558 = vmatpush1.msra.mxu0 0.0
  %2559 = vmatprep.subr.mxu0 0.0
  %2560 = vmatpush1.msra.mxu0 0.0
  %2561 = vmatprep.subr.mxu0 0.0
  %2562 = vmatpush1.msra.mxu0 0.0
  %2563 = vmatprep.subr.mxu0 0.0
  %2564 = vmatpush1.msra.mxu0 0.0
  %2565 = vmatprep.subr.mxu0 0.0
  %2566 = vmatpush1.msra.mxu0 0.0
  %2567 = vmatprep.subr.mxu0 0.0
  %2568 = vmatpush1.msra.mxu0 0.0
  %2569 = vmatprep.subr.mxu0 0.0
  %2570 = vmatpush1.msra.mxu0 0.0
  %2571 = vmatprep.subr.mxu0 0.0
  %2572 = vmatpush1.msra.mxu0 0.0
  %2573 = vmatprep.subr.mxu0 0.0
  %2574 = vmatpush1.msra.mxu0 0.0
  %2575 = vmatprep.subr.mxu0 0.0
  %2576 = vmatpush1.msra.mxu0 0.0
  %2577 = vmatprep.subr.mxu0 0.0
  %2578 = vmatpush1.msra.mxu0 0.0
  %2579 = vmatprep.subr.mxu0 0.0
  %2580 = vmatpush1.msra.mxu0 0.0
  %2581 = vmatprep.subr.mxu0 0.0
  %2582 = vmatpush1.msra.mxu0 0.0
  %2583 = vmatprep.subr.mxu0 0.0
  %2584 = vmatpush1.msra.mxu0 0.0
  %2585 = vmatprep.subr.mxu0 0.0
  %2586 = vmatpush1.msra.mxu0 0.0
  %2587 = vmatprep.subr.mxu0 0.0
  %2588 = vmatpush1.msra.mxu0 0.0
  %2589 = vmatprep.subr.mxu0 0.0
  %2590 = vmatpush1.msra.mxu0 0.0
  %2591 = vmatprep.subr.mxu0 0.0
  %2592 = vmatpush1.msra.mxu0 0.0
  %2593 = vmatprep.subr.mxu0 0.0
  %2594 = vmatpush1.msra.mxu0 0.0
  %2595 = vmatprep.subr.mxu0 0.0
  %2596 = vmatpush1.msra.mxu0 0.0
  %2597 = vmatprep.mubr.f32.mxu0 0.0
  %2598 = vmatmul.mubr.f32.gmra.mrb[0].mxu0 %v260
  %v2599 = vpop.f32.mrb[0].mxu0
  %v2600 = vadd.f32 0.0, %v2599
  %v2601 = vpop.f32.mrb[0].mxu0
  %2602 = vmatprep.mubr.f32.mxu0 0.0
  %2603 = vmatmul.mubr.f32.gmra.mrb[0].mxu0 %v263
  %v2604 = vpop.f32.mrb[0].mxu0
  %v2605 = vadd.f32 0.0, %v2604
  %v2606 = vpop.f32.mrb[0].mxu0
  %2607 = vdwg.mxu0
  %2608 = vmatprep.subr.mxu0 0.0
  %2609 = vmatpush1.msra.mxu0 %v64
  %2610 = vmatprep.subr.mxu0 0.0
  %2611 = vmatpush1.msra.mxu0 %v65
  %2612 = vmatprep.subr.mxu0 0.0
  %2613 = vmatpush1.msra.mxu0 %v66
  %2614 = vmatprep.subr.mxu0 0.0
  %2615 = vmatpush1.msra.mxu0 %v67
  %2616 = vmatprep.subr.mxu0 0.0
  %2617 = vmatpush1.msra.mxu0 0.0
  %2618 = vmatprep.subr.mxu0 0.0
  %2619 = vmatpush1.msra.mxu0 0.0
  %2620 = vmatprep.subr.mxu0 0.0
  %2621 = vmatpush1.msra.mxu0 0.0
  %2622 = vmatprep.subr.mxu0 0.0
  %2623 = vmatpush1.msra.mxu0 0.0
  %2624 = vmatprep.subr.mxu0 0.0
  %2625 = vmatpush1.msra.mxu0 0.0
  %2626 = vmatprep.subr.mxu0 0.0
  %2627 = vmatpush1.msra.mxu0 0.0
  %2628 = vmatprep.subr.mxu0 0.0
  %2629 = vmatpush1.msra.mxu0 0.0
  %2630 = vmatprep.subr.mxu0 0.0
  %2631 = vmatpush1.msra.mxu0 0.0
  %2632 = vmatprep.subr.mxu0 0.0
  %2633 = vmatpush1.msra.mxu0 0.0
  %2634 = vmatprep.subr.mxu0 0.0
  %2635 = vmatpush1.msra.mxu0 0.0
  %2636 = vmatprep.subr.mxu0 0.0
  %2637 = vmatpush1.msra.mxu0 0.0
  %2638 = vmatprep.subr.mxu0 0.0
  %2639 = vmatpush1.msra.mxu0 0.0
  %2640 = vmatprep.subr.mxu0 0.0
  %2641 = vmatpush1.msra.mxu0 0.0
  %2642 = vmatprep.subr.mxu0 0.0
  %2643 = vmatpush1.msra.mxu0 0.0
  %2644 = vmatprep.subr.mxu0 0.0
  %2645 = vmatpush1.msra.mxu0 0.0
  %2646 = vmatprep.subr.mxu0 0.0
  %2647 = vmatpush1.msra.mxu0 0.0
  %2648 = vmatprep.subr.mxu0 0.0
  %2649 = vmatpush1.msra.mxu0 0.0
  %2650 = vmatprep.subr.mxu0 0.0
  %2651 = vmatpush1.msra.mxu0 0.0
  %2652 = vmatprep.subr.mxu0 0.0
  %2653 = vmatpush1.msra.mxu0 0.0
  %2654 = vmatprep.subr.mxu0 0.0
  %2655 = vmatpush1.msra.mxu0 0.0
  %2656 = vmatprep.subr.mxu0 0.0
  %2657 = vmatpush1.msra.mxu0 0.0
  %2658 = vmatprep.subr.mxu0 0.0
  %2659 = vmatpush1.msra.mxu0 0.0
  %2660 = vmatprep.subr.mxu0 0.0
  %2661 = vmatpush1.msra.mxu0 0.0
  %2662 = vmatprep.subr.mxu0 0.0
  %2663 = vmatpush1.msra.mxu0 0.0
  %2664 = vmatprep.subr.mxu0 0.0
  %2665 = vmatpush1.msra.mxu0 0.0
  %2666 = vmatprep.subr.mxu0 0.0
  %2667 = vmatpush1.msra.mxu0 0.0
  %2668 = vmatprep.subr.mxu0 0.0
  %2669 = vmatpush1.msra.mxu0 0.0
  %2670 = vmatprep.subr.mxu0 0.0
  %2671 = vmatpush1.msra.mxu0 0.0
  %2672 = vmatprep.mubr.f32.mxu0 0.0
  %2673 = vmatmul.mubr.f32.gmra.mrb[0].mxu0 %v341
  %v2674 = vpop.f32.mrb[0].mxu0
  %v2675 = vadd.f32 0.0, %v2674
  %v2676 = vpop.f32.mrb[0].mxu0
  %2677 = vmatprep.mubr.f32.mxu0 0.0
  %2678 = vmatmul.mubr.f32.gmra.mrb[0].mxu0 %v344
  %v2679 = vpop.f32.mrb[0].mxu0
  %v2680 = vadd.f32 0.0, %v2679
  %v2681 = vpop.f32.mrb[0].mxu0
  %2682 = vdwg.mxu0
  %2683 = vmatprep.subr.mxu0 0.0
  %2684 = vmatpush1.msra.mxu0 %v64
  %2685 = vmatprep.subr.mxu0 0.0
  %2686 = vmatpush1.msra.mxu0 %v65
  %2687 = vmatprep.subr.mxu0 0.0
  %2688 = vmatpush1.msra.mxu0 %v66
  %2689 = vmatprep.subr.mxu0 0.0
  %2690 = vmatpush1.msra.mxu0 %v67
  %2691 = vmatprep.subr.mxu0 0.0
  %2692 = vmatpush1.msra.mxu0 0.0
  %2693 = vmatprep.subr.mxu0 0.0
  %2694 = vmatpush1.msra.mxu0 0.0
  %2695 = vmatprep.subr.mxu0 0.0
  %2696 = vmatpush1.msra.mxu0 0.0
  %2697 = vmatprep.subr.mxu0 0.0
  %2698 = vmatpush1.msra.mxu0 0.0
  %2699 = vmatprep.subr.mxu0 0.0
  %2700 = vmatpush1.msra.mxu0 0.0
  %2701 = vmatprep.subr.mxu0 0.0
  %2702 = vmatpush1.msra.mxu0 0.0
  %2703 = vmatprep.subr.mxu0 0.0
  %2704 = vmatpush1.msra.mxu0 0.0
  %2705 = vmatprep.subr.mxu0 0.0
  %2706 = vmatpush1.msra.mxu0 0.0
  %2707 = vmatprep.subr.mxu0 0.0
  %2708 = vmatpush1.msra.mxu0 0.0
  %2709 = vmatprep.subr.mxu0 0.0
  %2710 = vmatpush1.msra.mxu0 0.0
  %2711 = vmatprep.subr.mxu0 0.0
  %2712 = vmatpush1.msra.mxu0 0.0
  %2713 = vmatprep.subr.mxu0 0.0
  %2714 = vmatpush1.msra.mxu0 0.0
  %2715 = vmatprep.subr.mxu0 0.0
  %2716 = vmatpush1.msra.mxu0 0.0
  %2717 = vmatprep.subr.mxu0 0.0
  %2718 = vmatpush1.msra.mxu0 0.0
  %2719 = vmatprep.subr.mxu0 0.0
  %2720 = vmatpush1.msra.mxu0 0.0
  %2721 = vmatprep.subr.mxu0 0.0
  %2722 = vmatpush1.msra.mxu0 0.0
  %2723 = vmatprep.subr.mxu0 0.0
  %2724 = vmatpush1.msra.mxu0 0.0
  %2725 = vmatprep.subr.mxu0 0.0
  %2726 = vmatpush1.msra.mxu0 0.0
  %2727 = vmatprep.subr.mxu0 0.0
  %2728 = vmatpush1.msra.mxu0 0.0
  %2729 = vmatprep.subr.mxu0 0.0
  %2730 = vmatpush1.msra.mxu0 0.0
  %2731 = vmatprep.subr.mxu0 0.0
  %2732 = vmatpush1.msra.mxu0 0.0
  %2733 = vmatprep.subr.mxu0 0.0
  %2734 = vmatpush1.msra.mxu0 0.0
  %2735 = vmatprep.subr.mxu0 0.0
  %2736 = vmatpush1.msra.mxu0 0.0
  %2737 = vmatprep.subr.mxu0 0.0
  %2738 = vmatpush1.msra.mxu0 0.0
  %2739 = vmatprep.subr.mxu0 0.0
  %2740 = vmatpush1.msra.mxu0 0.0
  %2741 = vmatprep.subr.mxu0 0.0
  %2742 = vmatpush1.msra.mxu0 0.0
  %2743 = vmatprep.subr.mxu0 0.0
  %2744 = vmatpush1.msra.mxu0 0.0
  %2745 = vmatprep.subr.mxu0 0.0
  %2746 = vmatpush1.msra.mxu0 0.0
  %2747 = vmatprep.mubr.f32.mxu0 0.0
  %2748 = vmatmul.mubr.f32.gmra.mrb[0].mxu0 %v422
  %v2749 = vpop.f32.mrb[0].mxu0
  %v2750 = vadd.f32 0.0, %v2749
  %v2751 = vpop.f32.mrb[0].mxu0
  %2752 = vmatprep.mubr.f32.mxu0 0.0
  %2753 = vmatmul.mubr.f32.gmra.mrb[0].mxu0 %v425
  %v2754 = vpop.f32.mrb[0].mxu0
  %v2755 = vadd.f32 0.0, %v2754
  %v2756 = vpop.f32.mrb[0].mxu0
  %2757 = vdwg.mxu0
  %2758 = vmatprep.subr.mxu0 0.0
  %2759 = vmatpush1.msra.mxu0 %v64
  %2760 = vmatprep.subr.mxu0 0.0
  %2761 = vmatpush1.msra.mxu0 %v65
  %2762 = vmatprep.subr.mxu0 0.0
  %2763 = vmatpush1.msra.mxu0 %v66
  %2764 = vmatprep.subr.mxu0 0.0
  %2765 = vmatpush1.msra.mxu0 %v67
  %2766 = vmatprep.subr.mxu0 0.0
  %2767 = vmatpush1.msra.mxu0 0.0
  %2768 = vmatprep.subr.mxu0 0.0
  %2769 = vmatpush1.msra.mxu0 0.0
  %2770 = vmatprep.subr.mxu0 0.0
  %2771 = vmatpush1.msra.mxu0 0.0
  %2772 = vmatprep.subr.mxu0 0.0
  %2773 = vmatpush1.msra.mxu0 0.0
  %2774 = vmatprep.subr.mxu0 0.0
  %2775 = vmatpush1.msra.mxu0 0.0
  %2776 = vmatprep.subr.mxu0 0.0
  %2777 = vmatpush1.msra.mxu0 0.0
  %2778 = vmatprep.subr.mxu0 0.0
  %2779 = vmatpush1.msra.mxu0 0.0
  %2780 = vmatprep.subr.mxu0 0.0
  %2781 = vmatpush1.msra.mxu0 0.0
  %2782 = vmatprep.subr.mxu0 0.0
  %2783 = vmatpush1.msra.mxu0 0.0
  %2784 = vmatprep.subr.mxu0 0.0
  %2785 = vmatpush1.msra.mxu0 0.0
  %2786 = vmatprep.subr.mxu0 0.0
  %2787 = vmatpush1.msra.mxu0 0.0
  %2788 = vmatprep.subr.mxu0 0.0
  %2789 = vmatpush1.msra.mxu0 0.0
  %2790 = vmatprep.subr.mxu0 0.0
  %2791 = vmatpush1.msra.mxu0 0.0
  %2792 = vmatprep.subr.mxu0 0.0
  %2793 = vmatpush1.msra.mxu0 0.0
  %2794 = vmatprep.subr.mxu0 0.0
  %2795 = vmatpush1.msra.mxu0 0.0
  %2796 = vmatprep.subr.mxu0 0.0
  %2797 = vmatpush1.msra.mxu0 0.0
  %2798 = vmatprep.subr.mxu0 0.0
  %2799 = vmatpush1.msra.mxu0 0.0
  %2800 = vmatprep.subr.mxu0 0.0
  %2801 = vmatpush1.msra.mxu0 0.0
  %2802 = vmatprep.subr.mxu0 0.0
  %2803 = vmatpush1.msra.mxu0 0.0
  %2804 = vmatprep.subr.mxu0 0.0
  %2805 = vmatpush1.msra.mxu0 0.0
  %2806 = vmatprep.subr.mxu0 0.0
  %2807 = vmatpush1.msra.mxu0 0.0
  %2808 = vmatprep.subr.mxu0 0.0
  %2809 = vmatpush1.msra.mxu0 0.0
  %2810 = vmatprep.subr.mxu0 0.0
  %2811 = vmatpush1.msra.mxu0 0.0
  %2812 = vmatprep.subr.mxu0 0.0
  %2813 = vmatpush1.msra.mxu0 0.0
  %2814 = vmatprep.subr.mxu0 0.0
  %2815 = vmatpush1.msra.mxu0 0.0
  %2816 = vmatprep.subr.mxu0 0.0
  %2817 = vmatpush1.msra.mxu0 0.0
  %2818 = vmatprep.subr.mxu0 0.0
  %2819 = vmatpush1.msra.mxu0 0.0
  %2820 = vmatprep.subr.mxu0 0.0
  %2821 = vmatpush1.msra.mxu0 0.0
  %2822 = vmatprep.mubr.f32.mxu0 0.0
  %2823 = vmatmul.mubr.f32.gmra.mrb[0].mxu0 %v503
  %v2824 = vpop.f32.mrb[0].mxu0
  %v2825 = vadd.f32 0.0, %v2824
  %v2826 = vpop.f32.mrb[0].mxu0
  %2827 = vmatprep.mubr.f32.mxu0 0.0
  %2828 = vmatmul.mubr.f32.gmra.mrb[0].mxu0 %v506
  %v2829 = vpop.f32.mrb[0].mxu0
  %v2830 = vadd.f32 0.0, %v2829
  %v2831 = vpop.f32.mrb[0].mxu0
  %2832 = vdwg.mxu0
  %2833 = vmatprep.subr.mxu0 0.0
  %2834 = vmatpush1.msra.mxu0 %v68
  %2835 = vmatprep.subr.mxu0 0.0
  %2836 = vmatpush1.msra.mxu0 %v69
  %2837 = vmatprep.subr.mxu0 0.0
  %2838 = vmatpush1.msra.mxu0 %v70
  %2839 = vmatprep.subr.mxu0 0.0
  %2840 = vmatpush1.msra.mxu0 %v71
  %2841 = vmatprep.subr.mxu0 0.0
  %2842 = vmatpush1.msra.mxu0 0.0
  %2843 = vmatprep.subr.mxu0 0.0
  %2844 = vmatpush1.msra.mxu0 0.0
  %2845 = vmatprep.subr.mxu0 0.0
  %2846 = vmatpush1.msra.mxu0 0.0
  %2847 = vmatprep.subr.mxu0 0.0
  %2848 = vmatpush1.msra.mxu0 0.0
  %2849 = vmatprep.subr.mxu0 0.0
  %2850 = vmatpush1.msra.mxu0 0.0
  %2851 = vmatprep.subr.mxu0 0.0
  %2852 = vmatpush1.msra.mxu0 0.0
  %2853 = vmatprep.subr.mxu0 0.0
  %2854 = vmatpush1.msra.mxu0 0.0
  %2855 = vmatprep.subr.mxu0 0.0
  %2856 = vmatpush1.msra.mxu0 0.0
  %2857 = vmatprep.subr.mxu0 0.0
  %2858 = vmatpush1.msra.mxu0 0.0
  %2859 = vmatprep.subr.mxu0 0.0
  %2860 = vmatpush1.msra.mxu0 0.0
  %2861 = vmatprep.subr.mxu0 0.0
  %2862 = vmatpush1.msra.mxu0 0.0
  %2863 = vmatprep.subr.mxu0 0.0
  %2864 = vmatpush1.msra.mxu0 0.0
  %2865 = vmatprep.subr.mxu0 0.0
  %2866 = vmatpush1.msra.mxu0 0.0
  %2867 = vmatprep.subr.mxu0 0.0
  %2868 = vmatpush1.msra.mxu0 0.0
  %2869 = vmatprep.subr.mxu0 0.0
  %2870 = vmatpush1.msra.mxu0 0.0
  %2871 = vmatprep.subr.mxu0 0.0
  %2872 = vmatpush1.msra.mxu0 0.0
  %2873 = vmatprep.subr.mxu0 0.0
  %2874 = vmatpush1.msra.mxu0 0.0
  %2875 = vmatprep.subr.mxu0 0.0
  %2876 = vmatpush1.msra.mxu0 0.0
  %2877 = vmatprep.subr.mxu0 0.0
  %2878 = vmatpush1.msra.mxu0 0.0
  %2879 = vmatprep.subr.mxu0 0.0
  %2880 = vmatpush1.msra.mxu0 0.0
  %2881 = vmatprep.subr.mxu0 0.0
  %2882 = vmatpush1.msra.mxu0 0.0
  %2883 = vmatprep.subr.mxu0 0.0
  %2884 = vmatpush1.msra.mxu0 0.0
  %2885 = vmatprep.subr.mxu0 0.0
  %2886 = vmatpush1.msra.mxu0 0.0
  %2887 = vmatprep.subr.mxu0 0.0
  %2888 = vmatpush1.msra.mxu0 0.0
  %2889 = vmatprep.subr.mxu0 0.0
  %2890 = vmatpush1.msra.mxu0 0.0
  %2891 = vmatprep.subr.mxu0 0.0
  %2892 = vmatpush1.msra.mxu0 0.0
  %2893 = vmatprep.subr.mxu0 0.0
  %2894 = vmatpush1.msra.mxu0 0.0
  %2895 = vmatprep.subr.mxu0 0.0
  %2896 = vmatpush1.msra.mxu0 0.0
  %2897 = vmatprep.mubr.f32.mxu0 0.0
  %2898 = vmatmul.mubr.f32.gmra.mrb[0].mxu0 %v98
  %v2899 = vpop.f32.mrb[0].mxu0
  %v2900 = vadd.f32 0.0, %v2899
  %v2901 = vpop.f32.mrb[0].mxu0
  %2902 = vmatprep.mubr.f32.mxu0 0.0
  %2903 = vmatmul.mubr.f32.gmra.mrb[0].mxu0 %v101
  %v2904 = vpop.f32.mrb[0].mxu0
  %v2905 = vadd.f32 0.0, %v2904
  %v2906 = vpop.f32.mrb[0].mxu0
  %2907 = vdwg.mxu0
  %2908 = vmatprep.subr.mxu0 0.0
  %2909 = vmatpush1.msra.mxu0 %v68
  %2910 = vmatprep.subr.mxu0 0.0
  %2911 = vmatpush1.msra.mxu0 %v69
  %2912 = vmatprep.subr.mxu0 0.0
  %2913 = vmatpush1.msra.mxu0 %v70
  %2914 = vmatprep.subr.mxu0 0.0
  %2915 = vmatpush1.msra.mxu0 %v71
  %2916 = vmatprep.subr.mxu0 0.0
  %2917 = vmatpush1.msra.mxu0 0.0
  %2918 = vmatprep.subr.mxu0 0.0
  %2919 = vmatpush1.msra.mxu0 0.0
  %2920 = vmatprep.subr.mxu0 0.0
  %2921 = vmatpush1.msra.mxu0 0.0
  %2922 = vmatprep.subr.mxu0 0.0
  %2923 = vmatpush1.msra.mxu0 0.0
  %2924 = vmatprep.subr.mxu0 0.0
  %2925 = vmatpush1.msra.mxu0 0.0
  %2926 = vmatprep.subr.mxu0 0.0
  %2927 = vmatpush1.msra.mxu0 0.0
  %2928 = vmatprep.subr.mxu0 0.0
  %2929 = vmatpush1.msra.mxu0 0.0
  %2930 = vmatprep.subr.mxu0 0.0
  %2931 = vmatpush1.msra.mxu0 0.0
  %2932 = vmatprep.subr.mxu0 0.0
  %2933 = vmatpush1.msra.mxu0 0.0
  %2934 = vmatprep.subr.mxu0 0.0
  %2935 = vmatpush1.msra.mxu0 0.0
  %2936 = vmatprep.subr.mxu0 0.0
  %2937 = vmatpush1.msra.mxu0 0.0
  %2938 = vmatprep.subr.mxu0 0.0
  %2939 = vmatpush1.msra.mxu0 0.0
  %2940 = vmatprep.subr.mxu0 0.0
  %2941 = vmatpush1.msra.mxu0 0.0
  %2942 = vmatprep.subr.mxu0 0.0
  %2943 = vmatpush1.msra.mxu0 0.0
  %2944 = vmatprep.subr.mxu0 0.0
  %2945 = vmatpush1.msra.mxu0 0.0
  %2946 = vmatprep.subr.mxu0 0.0
  %2947 = vmatpush1.msra.mxu0 0.0
  %2948 = vmatprep.subr.mxu0 0.0
  %2949 = vmatpush1.msra.mxu0 0.0
  %2950 = vmatprep.subr.mxu0 0.0
  %2951 = vmatpush1.msra.mxu0 0.0
  %2952 = vmatprep.subr.mxu0 0.0
  %2953 = vmatpush1.msra.mxu0 0.0
  %2954 = vmatprep.subr.mxu0 0.0
  %2955 = vmatpush1.msra.mxu0 0.0
  %2956 = vmatprep.subr.mxu0 0.0
  %2957 = vmatpush1.msra.mxu0 0.0
  %2958 = vmatprep.subr.mxu0 0.0
  %2959 = vmatpush1.msra.mxu0 0.0
  %2960 = vmatprep.subr.mxu0 0.0
  %2961 = vmatpush1.msra.mxu0 0.0
  %2962 = vmatprep.subr.mxu0 0.0
  %2963 = vmatpush1.msra.mxu0 0.0
  %2964 = vmatprep.subr.mxu0 0.0
  %2965 = vmatpush1.msra.mxu0 0.0
  %2966 = vmatprep.subr.mxu0 0.0
  %2967 = vmatpush1.msra.mxu0 0.0
  %2968 = vmatprep.subr.mxu0 0.0
  %2969 = vmatpush1.msra.mxu0 0.0
  %2970 = vmatprep.subr.mxu0 0.0
  %2971 = vmatpush1.msra.mxu0 0.0
  %2972 = vmatprep.mubr.f32.mxu0 0.0
  %2973 = vmatmul.mubr.f32.gmra.mrb[0].mxu0 %v179
  %v2974 = vpop.f32.mrb[0].mxu0
  %v2975 = vadd.f32 0.0, %v2974
  %v2976 = vpop.f32.mrb[0].mxu0
  %2977 = vmatprep.mubr.f32.mxu0 0.0
  %2978 = vmatmul.mubr.f32.gmra.mrb[0].mxu0 %v182
  %v2979 = vpop.f32.mrb[0].mxu0
  %v2980 = vadd.f32 0.0, %v2979
  %v2981 = vpop.f32.mrb[0].mxu0
  %2982 = vdwg.mxu0
  %2983 = vmatprep.subr.mxu0 0.0
  %2984 = vmatpush1.msra.mxu0 %v68
  %2985 = vmatprep.subr.mxu0 0.0
  %2986 = vmatpush1.msra.mxu0 %v69
  %2987 = vmatprep.subr.mxu0 0.0
  %2988 = vmatpush1.msra.mxu0 %v70
  %2989 = vmatprep.subr.mxu0 0.0
  %2990 = vmatpush1.msra.mxu0 %v71
  %2991 = vmatprep.subr.mxu0 0.0
  %2992 = vmatpush1.msra.mxu0 0.0
  %2993 = vmatprep.subr.mxu0 0.0
  %2994 = vmatpush1.msra.mxu0 0.0
  %2995 = vmatprep.subr.mxu0 0.0
  %2996 = vmatpush1.msra.mxu0 0.0
  %2997 = vmatprep.subr.mxu0 0.0
  %2998 = vmatpush1.msra.mxu0 0.0
  %2999 = vmatprep.subr.mxu0 0.0
  %3000 = vmatpush1.msra.mxu0 0.0
  %3001 = vmatprep.subr.mxu0 0.0
  %3002 = vmatpush1.msra.mxu0 0.0
  %3003 = vmatprep.subr.mxu0 0.0
  %3004 = vmatpush1.msra.mxu0 0.0
  %3005 = vmatprep.subr.mxu0 0.0
  %3006 = vmatpush1.msra.mxu0 0.0
  %3007 = vmatprep.subr.mxu0 0.0
  %3008 = vmatpush1.msra.mxu0 0.0
  %3009 = vmatprep.subr.mxu0 0.0
  %3010 = vmatpush1.msra.mxu0 0.0
  %3011 = vmatprep.subr.mxu0 0.0
  %3012 = vmatpush1.msra.mxu0 0.0
  %3013 = vmatprep.subr.mxu0 0.0
  %3014 = vmatpush1.msra.mxu0 0.0
  %3015 = vmatprep.subr.mxu0 0.0
  %3016 = vmatpush1.msra.mxu0 0.0
  %3017 = vmatprep.subr.mxu0 0.0
  %3018 = vmatpush1.msra.mxu0 0.0
  %3019 = vmatprep.subr.mxu0 0.0
  %3020 = vmatpush1.msra.mxu0 0.0
  %3021 = vmatprep.subr.mxu0 0.0
  %3022 = vmatpush1.msra.mxu0 0.0
  %3023 = vmatprep.subr.mxu0 0.0
  %3024 = vmatpush1.msra.mxu0 0.0
  %3025 = vmatprep.subr.mxu0 0.0
  %3026 = vmatpush1.msra.mxu0 0.0
  %3027 = vmatprep.subr.mxu0 0.0
  %3028 = vmatpush1.msra.mxu0 0.0
  %3029 = vmatprep.subr.mxu0 0.0
  %3030 = vmatpush1.msra.mxu0 0.0
  %3031 = vmatprep.subr.mxu0 0.0
  %3032 = vmatpush1.msra.mxu0 0.0
  %3033 = vmatprep.subr.mxu0 0.0
  %3034 = vmatpush1.msra.mxu0 0.0
  %3035 = vmatprep.subr.mxu0 0.0
  %3036 = vmatpush1.msra.mxu0 0.0
  %3037 = vmatprep.subr.mxu0 0.0
  %3038 = vmatpush1.msra.mxu0 0.0
  %3039 = vmatprep.subr.mxu0 0.0
  %3040 = vmatpush1.msra.mxu0 0.0
  %3041 = vmatprep.subr.mxu0 0.0
  %3042 = vmatpush1.msra.mxu0 0.0
  %3043 = vmatprep.subr.mxu0 0.0
  %3044 = vmatpush1.msra.mxu0 0.0
  %3045 = vmatprep.subr.mxu0 0.0
  %3046 = vmatpush1.msra.mxu0 0.0
  %3047 = vmatprep.mubr.f32.mxu0 0.0
  %3048 = vmatmul.mubr.f32.gmra.mrb[0].mxu0 %v260
  %v3049 = vpop.f32.mrb[0].mxu0
  %v3050 = vadd.f32 0.0, %v3049
  %v3051 = vpop.f32.mrb[0].mxu0
  %3052 = vmatprep.mubr.f32.mxu0 0.0
  %3053 = vmatmul.mubr.f32.gmra.mrb[0].mxu0 %v263
  %v3054 = vpop.f32.mrb[0].mxu0
  %v3055 = vadd.f32 0.0, %v3054
  %v3056 = vpop.f32.mrb[0].mxu0
  %3057 = vdwg.mxu0
  %3058 = vmatprep.subr.mxu0 0.0
  %3059 = vmatpush1.msra.mxu0 %v68
  %3060 = vmatprep.subr.mxu0 0.0
  %3061 = vmatpush1.msra.mxu0 %v69
  %3062 = vmatprep.subr.mxu0 0.0
  %3063 = vmatpush1.msra.mxu0 %v70
  %3064 = vmatprep.subr.mxu0 0.0
  %3065 = vmatpush1.msra.mxu0 %v71
  %3066 = vmatprep.subr.mxu0 0.0
  %3067 = vmatpush1.msra.mxu0 0.0
  %3068 = vmatprep.subr.mxu0 0.0
  %3069 = vmatpush1.msra.mxu0 0.0
  %3070 = vmatprep.subr.mxu0 0.0
  %3071 = vmatpush1.msra.mxu0 0.0
  %3072 = vmatprep.subr.mxu0 0.0
  %3073 = vmatpush1.msra.mxu0 0.0
  %3074 = vmatprep.subr.mxu0 0.0
  %3075 = vmatpush1.msra.mxu0 0.0
  %3076 = vmatprep.subr.mxu0 0.0
  %3077 = vmatpush1.msra.mxu0 0.0
  %3078 = vmatprep.subr.mxu0 0.0
  %3079 = vmatpush1.msra.mxu0 0.0
  %3080 = vmatprep.subr.mxu0 0.0
  %3081 = vmatpush1.msra.mxu0 0.0
  %3082 = vmatprep.subr.mxu0 0.0
  %3083 = vmatpush1.msra.mxu0 0.0
  %3084 = vmatprep.subr.mxu0 0.0
  %3085 = vmatpush1.msra.mxu0 0.0
  %3086 = vmatprep.subr.mxu0 0.0
  %3087 = vmatpush1.msra.mxu0 0.0
  %3088 = vmatprep.subr.mxu0 0.0
  %3089 = vmatpush1.msra.mxu0 0.0
  %3090 = vmatprep.subr.mxu0 0.0
  %3091 = vmatpush1.msra.mxu0 0.0
  %3092 = vmatprep.subr.mxu0 0.0
  %3093 = vmatpush1.msra.mxu0 0.0
  %3094 = vmatprep.subr.mxu0 0.0
  %3095 = vmatpush1.msra.mxu0 0.0
  %3096 = vmatprep.subr.mxu0 0.0
  %3097 = vmatpush1.msra.mxu0 0.0
  %3098 = vmatprep.subr.mxu0 0.0
  %3099 = vmatpush1.msra.mxu0 0.0
  %3100 = vmatprep.subr.mxu0 0.0
  %3101 = vmatpush1.msra.mxu0 0.0
  %3102 = vmatprep.subr.mxu0 0.0
  %3103 = vmatpush1.msra.mxu0 0.0
  %3104 = vmatprep.subr.mxu0 0.0
  %3105 = vmatpush1.msra.mxu0 0.0
  %3106 = vmatprep.subr.mxu0 0.0
  %3107 = vmatpush1.msra.mxu0 0.0
  %3108 = vmatprep.subr.mxu0 0.0
  %3109 = vmatpush1.msra.mxu0 0.0
  %3110 = vmatprep.subr.mxu0 0.0
  %3111 = vmatpush1.msra.mxu0 0.0
  %3112 = vmatprep.subr.mxu0 0.0
  %3113 = vmatpush1.msra.mxu0 0.0
  %3114 = vmatprep.subr.mxu0 0.0
  %3115 = vmatpush1.msra.mxu0 0.0
  %3116 = vmatprep.subr.mxu0 0.0
  %3117 = vmatpush1.msra.mxu0 0.0
  %3118 = vmatprep.subr.mxu0 0.0
  %3119 = vmatpush1.msra.mxu0 0.0
  %3120 = vmatprep.subr.mxu0 0.0
  %3121 = vmatpush1.msra.mxu0 0.0
  %3122 = vmatprep.mubr.f32.mxu0 0.0
  %3123 = vmatmul.mubr.f32.gmra.mrb[0].mxu0 %v341
  %v3124 = vpop.f32.mrb[0].mxu0
  %v3125 = vadd.f32 0.0, %v3124
  %v3126 = vpop.f32.mrb[0].mxu0
  %3127 = vmatprep.mubr.f32.mxu0 0.0
  %3128 = vmatmul.mubr.f32.gmra.mrb[0].mxu0 %v344
  %v3129 = vpop.f32.mrb[0].mxu0
  %v3130 = vadd.f32 0.0, %v3129
  %v3131 = vpop.f32.mrb[0].mxu0
  %3132 = vdwg.mxu0
  %3133 = vmatprep.subr.mxu0 0.0
  %3134 = vmatpush1.msra.mxu0 %v68
  %3135 = vmatprep.subr.mxu0 0.0
  %3136 = vmatpush1.msra.mxu0 %v69
  %3137 = vmatprep.subr.mxu0 0.0
  %3138 = vmatpush1.msra.mxu0 %v70
  %3139 = vmatprep.subr.mxu0 0.0
  %3140 = vmatpush1.msra.mxu0 %v71
  %3141 = vmatprep.subr.mxu0 0.0
  %3142 = vmatpush1.msra.mxu0 0.0
  %3143 = vmatprep.subr.mxu0 0.0
  %3144 = vmatpush1.msra.mxu0 0.0
  %3145 = vmatprep.subr.mxu0 0.0
  %3146 = vmatpush1.msra.mxu0 0.0
  %3147 = vmatprep.subr.mxu0 0.0
  %3148 = vmatpush1.msra.mxu0 0.0
  %3149 = vmatprep.subr.mxu0 0.0
  %3150 = vmatpush1.msra.mxu0 0.0
  %3151 = vmatprep.subr.mxu0 0.0
  %3152 = vmatpush1.msra.mxu0 0.0
  %3153 = vmatprep.subr.mxu0 0.0
  %3154 = vmatpush1.msra.mxu0 0.0
  %3155 = vmatprep.subr.mxu0 0.0
  %3156 = vmatpush1.msra.mxu0 0.0
  %3157 = vmatprep.subr.mxu0 0.0
  %3158 = vmatpush1.msra.mxu0 0.0
  %3159 = vmatprep.subr.mxu0 0.0
  %3160 = vmatpush1.msra.mxu0 0.0
  %3161 = vmatprep.subr.mxu0 0.0
  %3162 = vmatpush1.msra.mxu0 0.0
  %3163 = vmatprep.subr.mxu0 0.0
  %3164 = vmatpush1.msra.mxu0 0.0
  %3165 = vmatprep.subr.mxu0 0.0
  %3166 = vmatpush1.msra.mxu0 0.0
  %3167 = vmatprep.subr.mxu0 0.0
  %3168 = vmatpush1.msra.mxu0 0.0
  %3169 = vmatprep.subr.mxu0 0.0
  %3170 = vmatpush1.msra.mxu0 0.0
  %3171 = vmatprep.subr.mxu0 0.0
  %3172 = vmatpush1.msra.mxu0 0.0
  %3173 = vmatprep.subr.mxu0 0.0
  %3174 = vmatpush1.msra.mxu0 0.0
  %3175 = vmatprep.subr.mxu0 0.0
  %3176 = vmatpush1.msra.mxu0 0.0
  %3177 = vmatprep.subr.mxu0 0.0
  %3178 = vmatpush1.msra.mxu0 0.0
  %3179 = vmatprep.subr.mxu0 0.0
  %3180 = vmatpush1.msra.mxu0 0.0
  %3181 = vmatprep.subr.mxu0 0.0
  %3182 = vmatpush1.msra.mxu0 0.0
  %3183 = vmatprep.subr.mxu0 0.0
  %3184 = vmatpush1.msra.mxu0 0.0
  %3185 = vmatprep.subr.mxu0 0.0
  %3186 = vmatpush1.msra.mxu0 0.0
  %3187 = vmatprep.subr.mxu0 0.0
  %3188 = vmatpush1.msra.mxu0 0.0
  %3189 = vmatprep.subr.mxu0 0.0
  %3190 = vmatpush1.msra.mxu0 0.0
  %3191 = vmatprep.subr.mxu0 0.0
  %3192 = vmatpush1.msra.mxu0 0.0
  %3193 = vmatprep.subr.mxu0 0.0
  %3194 = vmatpush1.msra.mxu0 0.0
  %3195 = vmatprep.subr.mxu0 0.0
  %3196 = vmatpush1.msra.mxu0 0.0
  %3197 = vmatprep.mubr.f32.mxu0 0.0
  %3198 = vmatmul.mubr.f32.gmra.mrb[0].mxu0 %v422
  %v3199 = vpop.f32.mrb[0].mxu0
  %v3200 = vadd.f32 0.0, %v3199
  %v3201 = vpop.f32.mrb[0].mxu0
  %3202 = vmatprep.mubr.f32.mxu0 0.0
  %3203 = vmatmul.mubr.f32.gmra.mrb[0].mxu0 %v425
  %v3204 = vpop.f32.mrb[0].mxu0
  %v3205 = vadd.f32 0.0, %v3204
  %v3206 = vpop.f32.mrb[0].mxu0
  %3207 = vdwg.mxu0
  %3208 = vmatprep.subr.mxu0 0.0
  %3209 = vmatpush1.msra.mxu0 %v68
  %3210 = vmatprep.subr.mxu0 0.0
  %3211 = vmatpush1.msra.mxu0 %v69
  %3212 = vmatprep.subr.mxu0 0.0
  %3213 = vmatpush1.msra.mxu0 %v70
  %3214 = vmatprep.subr.mxu0 0.0
  %3215 = vmatpush1.msra.mxu0 %v71
  %3216 = vmatprep.subr.mxu0 0.0
  %3217 = vmatpush1.msra.mxu0 0.0
  %3218 = vmatprep.subr.mxu0 0.0
  %3219 = vmatpush1.msra.mxu0 0.0
  %3220 = vmatprep.subr.mxu0 0.0
  %3221 = vmatpush1.msra.mxu0 0.0
  %3222 = vmatprep.subr.mxu0 0.0
  %3223 = vmatpush1.msra.mxu0 0.0
  %3224 = vmatprep.subr.mxu0 0.0
  %3225 = vmatpush1.msra.mxu0 0.0
  %3226 = vmatprep.subr.mxu0 0.0
  %3227 = vmatpush1.msra.mxu0 0.0
  %3228 = vmatprep.subr.mxu0 0.0
  %3229 = vmatpush1.msra.mxu0 0.0
  %3230 = vmatprep.subr.mxu0 0.0
  %3231 = vmatpush1.msra.mxu0 0.0
  %3232 = vmatprep.subr.mxu0 0.0
  %3233 = vmatpush1.msra.mxu0 0.0
  %3234 = vmatprep.subr.mxu0 0.0
  %3235 = vmatpush1.msra.mxu0 0.0
  %3236 = vmatprep.subr.mxu0 0.0
  %3237 = vmatpush1.msra.mxu0 0.0
  %3238 = vmatprep.subr.mxu0 0.0
  %3239 = vmatpush1.msra.mxu0 0.0
  %3240 = vmatprep.subr.mxu0 0.0
  %3241 = vmatpush1.msra.mxu0 0.0
  %3242 = vmatprep.subr.mxu0 0.0
  %3243 = vmatpush1.msra.mxu0 0.0
  %3244 = vmatprep.subr.mxu0 0.0
  %3245 = vmatpush1.msra.mxu0 0.0
  %3246 = vmatprep.subr.mxu0 0.0
  %3247 = vmatpush1.msra.mxu0 0.0
  %3248 = vmatprep.subr.mxu0 0.0
  %3249 = vmatpush1.msra.mxu0 0.0
  %3250 = vmatprep.subr.mxu0 0.0
  %3251 = vmatpush1.msra.mxu0 0.0
  %3252 = vmatprep.subr.mxu0 0.0
  %3253 = vmatpush1.msra.mxu0 0.0
  %3254 = vmatprep.subr.mxu0 0.0
  %3255 = vmatpush1.msra.mxu0 0.0
  %3256 = vmatprep.subr.mxu0 0.0
  %3257 = vmatpush1.msra.mxu0 0.0
  %3258 = vmatprep.subr.mxu0 0.0
  %3259 = vmatpush1.msra.mxu0 0.0
  %3260 = vmatprep.subr.mxu0 0.0
  %3261 = vmatpush1.msra.mxu0 0.0
  %3262 = vmatprep.subr.mxu0 0.0
  %3263 = vmatpush1.msra.mxu0 0.0
  %3264 = vmatprep.subr.mxu0 0.0
  %3265 = vmatpush1.msra.mxu0 0.0
  %3266 = vmatprep.subr.mxu0 0.0
  %3267 = vmatpush1.msra.mxu0 0.0
  %3268 = vmatprep.subr.mxu0 0.0
  %3269 = vmatpush1.msra.mxu0 0.0
  %3270 = vmatprep.subr.mxu0 0.0
  %3271 = vmatpush1.msra.mxu0 0.0
  %3272 = vmatprep.mubr.f32.mxu0 0.0
  %3273 = vmatmul.mubr.f32.gmra.mrb[0].mxu0 %v503
  %v3274 = vpop.f32.mrb[0].mxu0
  %v3275 = vadd.f32 0.0, %v3274
  %v3276 = vpop.f32.mrb[0].mxu0
  %3277 = vmatprep.mubr.f32.mxu0 0.0
  %3278 = vmatmul.mubr.f32.gmra.mrb[0].mxu0 %v506
  %v3279 = vpop.f32.mrb[0].mxu0
  %v3280 = vadd.f32 0.0, %v3279
  %v3281 = vpop.f32.mrb[0].mxu0
  %3282 = vdwg.mxu0
  %3283 = vmatprep.subr.mxu0 0.0
  %3284 = vmatpush1.msra.mxu0 %v72
  %3285 = vmatprep.subr.mxu0 0.0
  %3286 = vmatpush1.msra.mxu0 %v73
  %3287 = vmatprep.subr.mxu0 0.0
  %3288 = vmatpush1.msra.mxu0 %v74
  %3289 = vmatprep.subr.mxu0 0.0
  %3290 = vmatpush1.msra.mxu0 %v75
  %3291 = vmatprep.subr.mxu0 0.0
  %3292 = vmatpush1.msra.mxu0 0.0
  %3293 = vmatprep.subr.mxu0 0.0
  %3294 = vmatpush1.msra.mxu0 0.0
  %3295 = vmatprep.subr.mxu0 0.0
  %3296 = vmatpush1.msra.mxu0 0.0
  %3297 = vmatprep.subr.mxu0 0.0
  %3298 = vmatpush1.msra.mxu0 0.0
  %3299 = vmatprep.subr.mxu0 0.0
  %3300 = vmatpush1.msra.mxu0 0.0
  %3301 = vmatprep.subr.mxu0 0.0
  %3302 = vmatpush1.msra.mxu0 0.0
  %3303 = vmatprep.subr.mxu0 0.0
  %3304 = vmatpush1.msra.mxu0 0.0
  %3305 = vmatprep.subr.mxu0 0.0
  %3306 = vmatpush1.msra.mxu0 0.0
  %3307 = vmatprep.subr.mxu0 0.0
  %3308 = vmatpush1.msra.mxu0 0.0
  %3309 = vmatprep.subr.mxu0 0.0
  %3310 = vmatpush1.msra.mxu0 0.0
  %3311 = vmatprep.subr.mxu0 0.0
  %3312 = vmatpush1.msra.mxu0 0.0
  %3313 = vmatprep.subr.mxu0 0.0
  %3314 = vmatpush1.msra.mxu0 0.0
  %3315 = vmatprep.subr.mxu0 0.0
  %3316 = vmatpush1.msra.mxu0 0.0
  %3317 = vmatprep.subr.mxu0 0.0
  %3318 = vmatpush1.msra.mxu0 0.0
  %3319 = vmatprep.subr.mxu0 0.0
  %3320 = vmatpush1.msra.mxu0 0.0
  %3321 = vmatprep.subr.mxu0 0.0
  %3322 = vmatpush1.msra.mxu0 0.0
  %3323 = vmatprep.subr.mxu0 0.0
  %3324 = vmatpush1.msra.mxu0 0.0
  %3325 = vmatprep.subr.mxu0 0.0
  %3326 = vmatpush1.msra.mxu0 0.0
  %3327 = vmatprep.subr.mxu0 0.0
  %3328 = vmatpush1.msra.mxu0 0.0
  %3329 = vmatprep.subr.mxu0 0.0
  %3330 = vmatpush1.msra.mxu0 0.0
  %3331 = vmatprep.subr.mxu0 0.0
  %3332 = vmatpush1.msra.mxu0 0.0
  %3333 = vmatprep.subr.mxu0 0.0
  %3334 = vmatpush1.msra.mxu0 0.0
  %3335 = vmatprep.subr.mxu0 0.0
  %3336 = vmatpush1.msra.mxu0 0.0
  %3337 = vmatprep.subr.mxu0 0.0
  %3338 = vmatpush1.msra.mxu0 0.0
  %3339 = vmatprep.subr.mxu0 0.0
  %3340 = vmatpush1.msra.mxu0 0.0
  %3341 = vmatprep.subr.mxu0 0.0
  %3342 = vmatpush1.msra.mxu0 0.0
  %3343 = vmatprep.subr.mxu0 0.0
  %3344 = vmatpush1.msra.mxu0 0.0
  %3345 = vmatprep.subr.mxu0 0.0
  %3346 = vmatpush1.msra.mxu0 0.0
  %3347 = vmatprep.mubr.f32.mxu0 0.0
  %3348 = vmatmul.mubr.f32.gmra.mrb[0].mxu0 %v98
  %v3349 = vpop.f32.mrb[0].mxu0
  %v3350 = vadd.f32 0.0, %v3349
  %v3351 = vpop.f32.mrb[0].mxu0
  %3352 = vmatprep.mubr.f32.mxu0 0.0
  %3353 = vmatmul.mubr.f32.gmra.mrb[0].mxu0 %v101
  %v3354 = vpop.f32.mrb[0].mxu0
  %v3355 = vadd.f32 0.0, %v3354
  %v3356 = vpop.f32.mrb[0].mxu0
  %3357 = vdwg.mxu0
  %3358 = vmatprep.subr.mxu0 0.0
  %3359 = vmatpush1.msra.mxu0 %v72
  %3360 = vmatprep.subr.mxu0 0.0
  %3361 = vmatpush1.msra.mxu0 %v73
  %3362 = vmatprep.subr.mxu0 0.0
  %3363 = vmatpush1.msra.mxu0 %v74
  %3364 = vmatprep.subr.mxu0 0.0
  %3365 = vmatpush1.msra.mxu0 %v75
  %3366 = vmatprep.subr.mxu0 0.0
  %3367 = vmatpush1.msra.mxu0 0.0
  %3368 = vmatprep.subr.mxu0 0.0
  %3369 = vmatpush1.msra.mxu0 0.0
  %3370 = vmatprep.subr.mxu0 0.0
  %3371 = vmatpush1.msra.mxu0 0.0
  %3372 = vmatprep.subr.mxu0 0.0
  %3373 = vmatpush1.msra.mxu0 0.0
  %3374 = vmatprep.subr.mxu0 0.0
  %3375 = vmatpush1.msra.mxu0 0.0
  %3376 = vmatprep.subr.mxu0 0.0
  %3377 = vmatpush1.msra.mxu0 0.0
  %3378 = vmatprep.subr.mxu0 0.0
  %3379 = vmatpush1.msra.mxu0 0.0
  %3380 = vmatprep.subr.mxu0 0.0
  %3381 = vmatpush1.msra.mxu0 0.0
  %3382 = vmatprep.subr.mxu0 0.0
  %3383 = vmatpush1.msra.mxu0 0.0
  %3384 = vmatprep.subr.mxu0 0.0
  %3385 = vmatpush1.msra.mxu0 0.0
  %3386 = vmatprep.subr.mxu0 0.0
  %3387 = vmatpush1.msra.mxu0 0.0
  %3388 = vmatprep.subr.mxu0 0.0
  %3389 = vmatpush1.msra.mxu0 0.0
  %3390 = vmatprep.subr.mxu0 0.0
  %3391 = vmatpush1.msra.mxu0 0.0
  %3392 = vmatprep.subr.mxu0 0.0
  %3393 = vmatpush1.msra.mxu0 0.0
  %3394 = vmatprep.subr.mxu0 0.0
  %3395 = vmatpush1.msra.mxu0 0.0
  %3396 = vmatprep.subr.mxu0 0.0
  %3397 = vmatpush1.msra.mxu0 0.0
  %3398 = vmatprep.subr.mxu0 0.0
  %3399 = vmatpush1.msra.mxu0 0.0
  %3400 = vmatprep.subr.mxu0 0.0
  %3401 = vmatpush1.msra.mxu0 0.0
  %3402 = vmatprep.subr.mxu0 0.0
  %3403 = vmatpush1.msra.mxu0 0.0
  %3404 = vmatprep.subr.mxu0 0.0
  %3405 = vmatpush1.msra.mxu0 0.0
  %3406 = vmatprep.subr.mxu0 0.0
  %3407 = vmatpush1.msra.mxu0 0.0
  %3408 = vmatprep.subr.mxu0 0.0
  %3409 = vmatpush1.msra.mxu0 0.0
  %3410 = vmatprep.subr.mxu0 0.0
  %3411 = vmatpush1.msra.mxu0 0.0
  %3412 = vmatprep.subr.mxu0 0.0
  %3413 = vmatpush1.msra.mxu0 0.0
  %3414 = vmatprep.subr.mxu0 0.0
  %3415 = vmatpush1.msra.mxu0 0.0
  %3416 = vmatprep.subr.mxu0 0.0
  %3417 = vmatpush1.msra.mxu0 0.0
  %3418 = vmatprep.subr.mxu0 0.0
  %3419 = vmatpush1.msra.mxu0 0.0
  %3420 = vmatprep.subr.mxu0 0.0
  %3421 = vmatpush1.msra.mxu0 0.0
  %3422 = vmatprep.mubr.f32.mxu0 0.0
  %3423 = vmatmul.mubr.f32.gmra.mrb[0].mxu0 %v179
  %v3424 = vpop.f32.mrb[0].mxu0
  %v3425 = vadd.f32 0.0, %v3424
  %v3426 = vpop.f32.mrb[0].mxu0
  %3427 = vmatprep.mubr.f32.mxu0 0.0
  %3428 = vmatmul.mubr.f32.gmra.mrb[0].mxu0 %v182
  %v3429 = vpop.f32.mrb[0].mxu0
  %v3430 = vadd.f32 0.0, %v3429
  %v3431 = vpop.f32.mrb[0].mxu0
  %3432 = vdwg.mxu0
  %3433 = vmatprep.subr.mxu0 0.0
  %3434 = vmatpush1.msra.mxu0 %v72
  %3435 = vmatprep.subr.mxu0 0.0
  %3436 = vmatpush1.msra.mxu0 %v73
  %3437 = vmatprep.subr.mxu0 0.0
  %3438 = vmatpush1.msra.mxu0 %v74
  %3439 = vmatprep.subr.mxu0 0.0
  %3440 = vmatpush1.msra.mxu0 %v75
  %3441 = vmatprep.subr.mxu0 0.0
  %3442 = vmatpush1.msra.mxu0 0.0
  %3443 = vmatprep.subr.mxu0 0.0
  %3444 = vmatpush1.msra.mxu0 0.0
  %3445 = vmatprep.subr.mxu0 0.0
  %3446 = vmatpush1.msra.mxu0 0.0
  %3447 = vmatprep.subr.mxu0 0.0
  %3448 = vmatpush1.msra.mxu0 0.0
  %3449 = vmatprep.subr.mxu0 0.0
  %3450 = vmatpush1.msra.mxu0 0.0
  %3451 = vmatprep.subr.mxu0 0.0
  %3452 = vmatpush1.msra.mxu0 0.0
  %3453 = vmatprep.subr.mxu0 0.0
  %3454 = vmatpush1.msra.mxu0 0.0
  %3455 = vmatprep.subr.mxu0 0.0
  %3456 = vmatpush1.msra.mxu0 0.0
  %3457 = vmatprep.subr.mxu0 0.0
  %3458 = vmatpush1.msra.mxu0 0.0
  %3459 = vmatprep.subr.mxu0 0.0
  %3460 = vmatpush1.msra.mxu0 0.0
  %3461 = vmatprep.subr.mxu0 0.0
  %3462 = vmatpush1.msra.mxu0 0.0
  %3463 = vmatprep.subr.mxu0 0.0
  %3464 = vmatpush1.msra.mxu0 0.0
  %3465 = vmatprep.subr.mxu0 0.0
  %3466 = vmatpush1.msra.mxu0 0.0
  %3467 = vmatprep.subr.mxu0 0.0
  %3468 = vmatpush1.msra.mxu0 0.0
  %3469 = vmatprep.subr.mxu0 0.0
  %3470 = vmatpush1.msra.mxu0 0.0
  %3471 = vmatprep.subr.mxu0 0.0
  %3472 = vmatpush1.msra.mxu0 0.0
  %3473 = vmatprep.subr.mxu0 0.0
  %3474 = vmatpush1.msra.mxu0 0.0
  %3475 = vmatprep.subr.mxu0 0.0
  %3476 = vmatpush1.msra.mxu0 0.0
  %3477 = vmatprep.subr.mxu0 0.0
  %3478 = vmatpush1.msra.mxu0 0.0
  %3479 = vmatprep.subr.mxu0 0.0
  %3480 = vmatpush1.msra.mxu0 0.0
  %3481 = vmatprep.subr.mxu0 0.0
  %3482 = vmatpush1.msra.mxu0 0.0
  %3483 = vmatprep.subr.mxu0 0.0
  %3484 = vmatpush1.msra.mxu0 0.0
  %3485 = vmatprep.subr.mxu0 0.0
  %3486 = vmatpush1.msra.mxu0 0.0
  %3487 = vmatprep.subr.mxu0 0.0
  %3488 = vmatpush1.msra.mxu0 0.0
  %3489 = vmatprep.subr.mxu0 0.0
  %3490 = vmatpush1.msra.mxu0 0.0
  %3491 = vmatprep.subr.mxu0 0.0
  %3492 = vmatpush1.msra.mxu0 0.0
  %3493 = vmatprep.subr.mxu0 0.0
  %3494 = vmatpush1.msra.mxu0 0.0
  %3495 = vmatprep.subr.mxu0 0.0
  %3496 = vmatpush1.msra.mxu0 0.0
  %3497 = vmatprep.mubr.f32.mxu0 0.0
  %3498 = vmatmul.mubr.f32.gmra.mrb[0].mxu0 %v260
  %v3499 = vpop.f32.mrb[0].mxu0
  %v3500 = vadd.f32 0.0, %v3499
  %v3501 = vpop.f32.mrb[0].mxu0
  %3502 = vmatprep.mubr.f32.mxu0 0.0
  %3503 = vmatmul.mubr.f32.gmra.mrb[0].mxu0 %v263
  %v3504 = vpop.f32.mrb[0].mxu0
  %v3505 = vadd.f32 0.0, %v3504
  %v3506 = vpop.f32.mrb[0].mxu0
  %3507 = vdwg.mxu0
  %3508 = vmatprep.subr.mxu0 0.0
  %3509 = vmatpush1.msra.mxu0 %v72
  %3510 = vmatprep.subr.mxu0 0.0
  %3511 = vmatpush1.msra.mxu0 %v73
  %3512 = vmatprep.subr.mxu0 0.0
  %3513 = vmatpush1.msra.mxu0 %v74
  %3514 = vmatprep.subr.mxu0 0.0
  %3515 = vmatpush1.msra.mxu0 %v75
  %3516 = vmatprep.subr.mxu0 0.0
  %3517 = vmatpush1.msra.mxu0 0.0
  %3518 = vmatprep.subr.mxu0 0.0
  %3519 = vmatpush1.msra.mxu0 0.0
  %3520 = vmatprep.subr.mxu0 0.0
  %3521 = vmatpush1.msra.mxu0 0.0
  %3522 = vmatprep.subr.mxu0 0.0
  %3523 = vmatpush1.msra.mxu0 0.0
  %3524 = vmatprep.subr.mxu0 0.0
  %3525 = vmatpush1.msra.mxu0 0.0
  %3526 = vmatprep.subr.mxu0 0.0
  %3527 = vmatpush1.msra.mxu0 0.0
  %3528 = vmatprep.subr.mxu0 0.0
  %3529 = vmatpush1.msra.mxu0 0.0
  %3530 = vmatprep.subr.mxu0 0.0
  %3531 = vmatpush1.msra.mxu0 0.0
  %3532 = vmatprep.subr.mxu0 0.0
  %3533 = vmatpush1.msra.mxu0 0.0
  %3534 = vmatprep.subr.mxu0 0.0
  %3535 = vmatpush1.msra.mxu0 0.0
  %3536 = vmatprep.subr.mxu0 0.0
  %3537 = vmatpush1.msra.mxu0 0.0
  %3538 = vmatprep.subr.mxu0 0.0
  %3539 = vmatpush1.msra.mxu0 0.0
  %3540 = vmatprep.subr.mxu0 0.0
  %3541 = vmatpush1.msra.mxu0 0.0
  %3542 = vmatprep.subr.mxu0 0.0
  %3543 = vmatpush1.msra.mxu0 0.0
  %3544 = vmatprep.subr.mxu0 0.0
  %3545 = vmatpush1.msra.mxu0 0.0
  %3546 = vmatprep.subr.mxu0 0.0
  %3547 = vmatpush1.msra.mxu0 0.0
  %3548 = vmatprep.subr.mxu0 0.0
  %3549 = vmatpush1.msra.mxu0 0.0
  %3550 = vmatprep.subr.mxu0 0.0
  %3551 = vmatpush1.msra.mxu0 0.0
  %3552 = vmatprep.subr.mxu0 0.0
  %3553 = vmatpush1.msra.mxu0 0.0
  %3554 = vmatprep.subr.mxu0 0.0
  %3555 = vmatpush1.msra.mxu0 0.0
  %3556 = vmatprep.subr.mxu0 0.0
  %3557 = vmatpush1.msra.mxu0 0.0
  %3558 = vmatprep.subr.mxu0 0.0
  %3559 = vmatpush1.msra.mxu0 0.0
  %3560 = vmatprep.subr.mxu0 0.0
  %3561 = vmatpush1.msra.mxu0 0.0
  %3562 = vmatprep.subr.mxu0 0.0
  %3563 = vmatpush1.msra.mxu0 0.0
  %3564 = vmatprep.subr.mxu0 0.0
  %3565 = vmatpush1.msra.mxu0 0.0
  %3566 = vmatprep.subr.mxu0 0.0
  %3567 = vmatpush1.msra.mxu0 0.0
  %3568 = vmatprep.subr.mxu0 0.0
  %3569 = vmatpush1.msra.mxu0 0.0
  %3570 = vmatprep.subr.mxu0 0.0
  %3571 = vmatpush1.msra.mxu0 0.0
  %3572 = vmatprep.mubr.f32.mxu0 0.0
  %3573 = vmatmul.mubr.f32.gmra.mrb[0].mxu0 %v341
  %v3574 = vpop.f32.mrb[0].mxu0
  %v3575 = vadd.f32 0.0, %v3574
  %v3576 = vpop.f32.mrb[0].mxu0
  %3577 = vmatprep.mubr.f32.mxu0 0.0
  %3578 = vmatmul.mubr.f32.gmra.mrb[0].mxu0 %v344
  %v3579 = vpop.f32.mrb[0].mxu0
  %v3580 = vadd.f32 0.0, %v3579
  %v3581 = vpop.f32.mrb[0].mxu0
  %3582 = vdwg.mxu0
  %3583 = vmatprep.subr.mxu0 0.0
  %3584 = vmatpush1.msra.mxu0 %v72
  %3585 = vmatprep.subr.mxu0 0.0
  %3586 = vmatpush1.msra.mxu0 %v73
  %3587 = vmatprep.subr.mxu0 0.0
  %3588 = vmatpush1.msra.mxu0 %v74
  %3589 = vmatprep.subr.mxu0 0.0
  %3590 = vmatpush1.msra.mxu0 %v75
  %3591 = vmatprep.subr.mxu0 0.0
  %3592 = vmatpush1.msra.mxu0 0.0
  %3593 = vmatprep.subr.mxu0 0.0
  %3594 = vmatpush1.msra.mxu0 0.0
  %3595 = vmatprep.subr.mxu0 0.0
  %3596 = vmatpush1.msra.mxu0 0.0
  %3597 = vmatprep.subr.mxu0 0.0
  %3598 = vmatpush1.msra.mxu0 0.0
  %3599 = vmatprep.subr.mxu0 0.0
  %3600 = vmatpush1.msra.mxu0 0.0
  %3601 = vmatprep.subr.mxu0 0.0
  %3602 = vmatpush1.msra.mxu0 0.0
  %3603 = vmatprep.subr.mxu0 0.0
  %3604 = vmatpush1.msra.mxu0 0.0
  %3605 = vmatprep.subr.mxu0 0.0
  %3606 = vmatpush1.msra.mxu0 0.0
  %3607 = vmatprep.subr.mxu0 0.0
  %3608 = vmatpush1.msra.mxu0 0.0
  %3609 = vmatprep.subr.mxu0 0.0
  %3610 = vmatpush1.msra.mxu0 0.0
  %3611 = vmatprep.subr.mxu0 0.0
  %3612 = vmatpush1.msra.mxu0 0.0
  %3613 = vmatprep.subr.mxu0 0.0
  %3614 = vmatpush1.msra.mxu0 0.0
  %3615 = vmatprep.subr.mxu0 0.0
  %3616 = vmatpush1.msra.mxu0 0.0
  %3617 = vmatprep.subr.mxu0 0.0
  %3618 = vmatpush1.msra.mxu0 0.0
  %3619 = vmatprep.subr.mxu0 0.0
  %3620 = vmatpush1.msra.mxu0 0.0
  %3621 = vmatprep.subr.mxu0 0.0
  %3622 = vmatpush1.msra.mxu0 0.0
  %3623 = vmatprep.subr.mxu0 0.0
  %3624 = vmatpush1.msra.mxu0 0.0
  %3625 = vmatprep.subr.mxu0 0.0
  %3626 = vmatpush1.msra.mxu0 0.0
  %3627 = vmatprep.subr.mxu0 0.0
  %3628 = vmatpush1.msra.mxu0 0.0
  %3629 = vmatprep.subr.mxu0 0.0
  %3630 = vmatpush1.msra.mxu0 0.0
  %3631 = vmatprep.subr.mxu0 0.0
  %3632 = vmatpush1.msra.mxu0 0.0
  %3633 = vmatprep.subr.mxu0 0.0
  %3634 = vmatpush1.msra.mxu0 0.0
  %3635 = vmatprep.subr.mxu0 0.0
  %3636 = vmatpush1.msra.mxu0 0.0
  %3637 = vmatprep.subr.mxu0 0.0
  %3638 = vmatpush1.msra.mxu0 0.0
  %3639 = vmatprep.subr.mxu0 0.0
  %3640 = vmatpush1.msra.mxu0 0.0
  %3641 = vmatprep.subr.mxu0 0.0
  %3642 = vmatpush1.msra.mxu0 0.0
  %3643 = vmatprep.subr.mxu0 0.0
  %3644 = vmatpush1.msra.mxu0 0.0
  %3645 = vmatprep.subr.mxu0 0.0
  %3646 = vmatpush1.msra.mxu0 0.0
  %3647 = vmatprep.mubr.f32.mxu0 0.0
  %3648 = vmatmul.mubr.f32.gmra.mrb[0].mxu0 %v422
  %v3649 = vpop.f32.mrb[0].mxu0
  %v3650 = vadd.f32 0.0, %v3649
  %v3651 = vpop.f32.mrb[0].mxu0
  %3652 = vmatprep.mubr.f32.mxu0 0.0
  %3653 = vmatmul.mubr.f32.gmra.mrb[0].mxu0 %v425
  %v3654 = vpop.f32.mrb[0].mxu0
  %v3655 = vadd.f32 0.0, %v3654
  %v3656 = vpop.f32.mrb[0].mxu0
  %3657 = vdwg.mxu0
  %3658 = vmatprep.subr.mxu0 0.0
  %3659 = vmatpush1.msra.mxu0 %v72
  %3660 = vmatprep.subr.mxu0 0.0
  %3661 = vmatpush1.msra.mxu0 %v73
  %3662 = vmatprep.subr.mxu0 0.0
  %3663 = vmatpush1.msra.mxu0 %v74
  %3664 = vmatprep.subr.mxu0 0.0
  %3665 = vmatpush1.msra.mxu0 %v75
  %3666 = vmatprep.subr.mxu0 0.0
  %3667 = vmatpush1.msra.mxu0 0.0
  %3668 = vmatprep.subr.mxu0 0.0
  %3669 = vmatpush1.msra.mxu0 0.0
  %3670 = vmatprep.subr.mxu0 0.0
  %3671 = vmatpush1.msra.mxu0 0.0
  %3672 = vmatprep.subr.mxu0 0.0
  %3673 = vmatpush1.msra.mxu0 0.0
  %3674 = vmatprep.subr.mxu0 0.0
  %3675 = vmatpush1.msra.mxu0 0.0
  %3676 = vmatprep.subr.mxu0 0.0
  %3677 = vmatpush1.msra.mxu0 0.0
  %3678 = vmatprep.subr.mxu0 0.0
  %3679 = vmatpush1.msra.mxu0 0.0
  %3680 = vmatprep.subr.mxu0 0.0
  %3681 = vmatpush1.msra.mxu0 0.0
  %3682 = vmatprep.subr.mxu0 0.0
  %3683 = vmatpush1.msra.mxu0 0.0
  %3684 = vmatprep.subr.mxu0 0.0
  %3685 = vmatpush1.msra.mxu0 0.0
  %3686 = vmatprep.subr.mxu0 0.0
  %3687 = vmatpush1.msra.mxu0 0.0
  %3688 = vmatprep.subr.mxu0 0.0
  %3689 = vmatpush1.msra.mxu0 0.0
  %3690 = vmatprep.subr.mxu0 0.0
  %3691 = vmatpush1.msra.mxu0 0.0
  %3692 = vmatprep.subr.mxu0 0.0
  %3693 = vmatpush1.msra.mxu0 0.0
  %3694 = vmatprep.subr.mxu0 0.0
  %3695 = vmatpush1.msra.mxu0 0.0
  %3696 = vmatprep.subr.mxu0 0.0
  %3697 = vmatpush1.msra.mxu0 0.0
  %3698 = vmatprep.subr.mxu0 0.0
  %3699 = vmatpush1.msra.mxu0 0.0
  %3700 = vmatprep.subr.mxu0 0.0
  %3701 = vmatpush1.msra.mxu0 0.0
  %3702 = vmatprep.subr.mxu0 0.0
  %3703 = vmatpush1.msra.mxu0 0.0
  %3704 = vmatprep.subr.mxu0 0.0
  %3705 = vmatpush1.msra.mxu0 0.0
  %3706 = vmatprep.subr.mxu0 0.0
  %3707 = vmatpush1.msra.mxu0 0.0
  %3708 = vmatprep.subr.mxu0 0.0
  %3709 = vmatpush1.msra.mxu0 0.0
  %3710 = vmatprep.subr.mxu0 0.0
  %3711 = vmatpush1.msra.mxu0 0.0
  %3712 = vmatprep.subr.mxu0 0.0
  %3713 = vmatpush1.msra.mxu0 0.0
  %3714 = vmatprep.subr.mxu0 0.0
  %3715 = vmatpush1.msra.mxu0 0.0
  %3716 = vmatprep.subr.mxu0 0.0
  %3717 = vmatpush1.msra.mxu0 0.0
  %3718 = vmatprep.subr.mxu0 0.0
  %3719 = vmatpush1.msra.mxu0 0.0
  %3720 = vmatprep.subr.mxu0 0.0
  %3721 = vmatpush1.msra.mxu0 0.0
  %3722 = vmatprep.mubr.f32.mxu0 0.0
  %3723 = vmatmul.mubr.f32.gmra.mrb[0].mxu0 %v503
  %v3724 = vpop.f32.mrb[0].mxu0
  %v3725 = vadd.f32 0.0, %v3724
  %v3726 = vpop.f32.mrb[0].mxu0
  %3727 = vmatprep.mubr.f32.mxu0 0.0
  %3728 = vmatmul.mubr.f32.gmra.mrb[0].mxu0 %v506
  %v3729 = vpop.f32.mrb[0].mxu0
  %v3730 = vadd.f32 0.0, %v3729
  %v3731 = vpop.f32.mrb[0].mxu0
  %3732 = vdwg.mxu0
  %3733 = vmatprep.subr.mxu0 0.0
  %3734 = vmatpush1.msra.mxu0 %v76
  %3735 = vmatprep.subr.mxu0 0.0
  %3736 = vmatpush1.msra.mxu0 %v77
  %3737 = vmatprep.subr.mxu0 0.0
  %3738 = vmatpush1.msra.mxu0 %v78
  %3739 = vmatprep.subr.mxu0 0.0
  %3740 = vmatpush1.msra.mxu0 %v79
  %3741 = vmatprep.subr.mxu0 0.0
  %3742 = vmatpush1.msra.mxu0 0.0
  %3743 = vmatprep.subr.mxu0 0.0
  %3744 = vmatpush1.msra.mxu0 0.0
  %3745 = vmatprep.subr.mxu0 0.0
  %3746 = vmatpush1.msra.mxu0 0.0
  %3747 = vmatprep.subr.mxu0 0.0
  %3748 = vmatpush1.msra.mxu0 0.0
  %3749 = vmatprep.subr.mxu0 0.0
  %3750 = vmatpush1.msra.mxu0 0.0
  %3751 = vmatprep.subr.mxu0 0.0
  %3752 = vmatpush1.msra.mxu0 0.0
  %3753 = vmatprep.subr.mxu0 0.0
  %3754 = vmatpush1.msra.mxu0 0.0
  %3755 = vmatprep.subr.mxu0 0.0
  %3756 = vmatpush1.msra.mxu0 0.0
  %3757 = vmatprep.subr.mxu0 0.0
  %3758 = vmatpush1.msra.mxu0 0.0
  %3759 = vmatprep.subr.mxu0 0.0
  %3760 = vmatpush1.msra.mxu0 0.0
  %3761 = vmatprep.subr.mxu0 0.0
  %3762 = vmatpush1.msra.mxu0 0.0
  %3763 = vmatprep.subr.mxu0 0.0
  %3764 = vmatpush1.msra.mxu0 0.0
  %3765 = vmatprep.subr.mxu0 0.0
  %3766 = vmatpush1.msra.mxu0 0.0
  %3767 = vmatprep.subr.mxu0 0.0
  %3768 = vmatpush1.msra.mxu0 0.0
  %3769 = vmatprep.subr.mxu0 0.0
  %3770 = vmatpush1.msra.mxu0 0.0
  %3771 = vmatprep.subr.mxu0 0.0
  %3772 = vmatpush1.msra.mxu0 0.0
  %3773 = vmatprep.subr.mxu0 0.0
  %3774 = vmatpush1.msra.mxu0 0.0
  %3775 = vmatprep.subr.mxu0 0.0
  %3776 = vmatpush1.msra.mxu0 0.0
  %3777 = vmatprep.subr.mxu0 0.0
  %3778 = vmatpush1.msra.mxu0 0.0
  %3779 = vmatprep.subr.mxu0 0.0
  %3780 = vmatpush1.msra.mxu0 0.0
  %3781 = vmatprep.subr.mxu0 0.0
  %3782 = vmatpush1.msra.mxu0 0.0
  %3783 = vmatprep.subr.mxu0 0.0
  %3784 = vmatpush1.msra.mxu0 0.0
  %3785 = vmatprep.subr.mxu0 0.0
  %3786 = vmatpush1.msra.mxu0 0.0
  %3787 = vmatprep.subr.mxu0 0.0
  %3788 = vmatpush1.msra.mxu0 0.0
  %3789 = vmatprep.subr.mxu0 0.0
  %3790 = vmatpush1.msra.mxu0 0.0
  %3791 = vmatprep.subr.mxu0 0.0
  %3792 = vmatpush1.msra.mxu0 0.0
  %3793 = vmatprep.subr.mxu0 0.0
  %3794 = vmatpush1.msra.mxu0 0.0
  %3795 = vmatprep.subr.mxu0 0.0
  %3796 = vmatpush1.msra.mxu0 0.0
  %3797 = vmatprep.mubr.f32.mxu0 0.0
  %3798 = vmatmul.mubr.f32.gmra.mrb[0].mxu0 %v98
  %v3799 = vpop.f32.mrb[0].mxu0
  %v3800 = vadd.f32 0.0, %v3799
  %v3801 = vpop.f32.mrb[0].mxu0
  %3802 = vmatprep.mubr.f32.mxu0 0.0
  %3803 = vmatmul.mubr.f32.gmra.mrb[0].mxu0 %v101
  %v3804 = vpop.f32.mrb[0].mxu0
  %v3805 = vadd.f32 0.0, %v3804
  %v3806 = vpop.f32.mrb[0].mxu0
  %3807 = vdwg.mxu0
  %3808 = vmatprep.subr.mxu0 0.0
  %3809 = vmatpush1.msra.mxu0 %v76
  %3810 = vmatprep.subr.mxu0 0.0
  %3811 = vmatpush1.msra.mxu0 %v77
  %3812 = vmatprep.subr.mxu0 0.0
  %3813 = vmatpush1.msra.mxu0 %v78
  %3814 = vmatprep.subr.mxu0 0.0
  %3815 = vmatpush1.msra.mxu0 %v79
  %3816 = vmatprep.subr.mxu0 0.0
  %3817 = vmatpush1.msra.mxu0 0.0
  %3818 = vmatprep.subr.mxu0 0.0
  %3819 = vmatpush1.msra.mxu0 0.0
  %3820 = vmatprep.subr.mxu0 0.0
  %3821 = vmatpush1.msra.mxu0 0.0
  %3822 = vmatprep.subr.mxu0 0.0
  %3823 = vmatpush1.msra.mxu0 0.0
  %3824 = vmatprep.subr.mxu0 0.0
  %3825 = vmatpush1.msra.mxu0 0.0
  %3826 = vmatprep.subr.mxu0 0.0
  %3827 = vmatpush1.msra.mxu0 0.0
  %3828 = vmatprep.subr.mxu0 0.0
  %3829 = vmatpush1.msra.mxu0 0.0
  %3830 = vmatprep.subr.mxu0 0.0
  %3831 = vmatpush1.msra.mxu0 0.0
  %3832 = vmatprep.subr.mxu0 0.0
  %3833 = vmatpush1.msra.mxu0 0.0
  %3834 = vmatprep.subr.mxu0 0.0
  %3835 = vmatpush1.msra.mxu0 0.0
  %3836 = vmatprep.subr.mxu0 0.0
  %3837 = vmatpush1.msra.mxu0 0.0
  %3838 = vmatprep.subr.mxu0 0.0
  %3839 = vmatpush1.msra.mxu0 0.0
  %3840 = vmatprep.subr.mxu0 0.0
  %3841 = vmatpush1.msra.mxu0 0.0
  %3842 = vmatprep.subr.mxu0 0.0
  %3843 = vmatpush1.msra.mxu0 0.0
  %3844 = vmatprep.subr.mxu0 0.0
  %3845 = vmatpush1.msra.mxu0 0.0
  %3846 = vmatprep.subr.mxu0 0.0
  %3847 = vmatpush1.msra.mxu0 0.0
  %3848 = vmatprep.subr.mxu0 0.0
  %3849 = vmatpush1.msra.mxu0 0.0
  %3850 = vmatprep.subr.mxu0 0.0
  %3851 = vmatpush1.msra.mxu0 0.0
  %3852 = vmatprep.subr.mxu0 0.0
  %3853 = vmatpush1.msra.mxu0 0.0
  %3854 = vmatprep.subr.mxu0 0.0
  %3855 = vmatpush1.msra.mxu0 0.0
  %3856 = vmatprep.subr.mxu0 0.0
  %3857 = vmatpush1.msra.mxu0 0.0
  %3858 = vmatprep.subr.mxu0 0.0
  %3859 = vmatpush1.msra.mxu0 0.0
  %3860 = vmatprep.subr.mxu0 0.0
  %3861 = vmatpush1.msra.mxu0 0.0
  %3862 = vmatprep.subr.mxu0 0.0
  %3863 = vmatpush1.msra.mxu0 0.0
  %3864 = vmatprep.subr.mxu0 0.0
  %3865 = vmatpush1.msra.mxu0 0.0
  %3866 = vmatprep.subr.mxu0 0.0
  %3867 = vmatpush1.msra.mxu0 0.0
  %3868 = vmatprep.subr.mxu0 0.0
  %3869 = vmatpush1.msra.mxu0 0.0
  %3870 = vmatprep.subr.mxu0 0.0
  %3871 = vmatpush1.msra.mxu0 0.0
  %3872 = vmatprep.mubr.f32.mxu0 0.0
  %3873 = vmatmul.mubr.f32.gmra.mrb[0].mxu0 %v179
  %v3874 = vpop.f32.mrb[0].mxu0
  %v3875 = vadd.f32 0.0, %v3874
  %v3876 = vpop.f32.mrb[0].mxu0
  %3877 = vmatprep.mubr.f32.mxu0 0.0
  %3878 = vmatmul.mubr.f32.gmra.mrb[0].mxu0 %v182
  %v3879 = vpop.f32.mrb[0].mxu0
  %v3880 = vadd.f32 0.0, %v3879
  %v3881 = vpop.f32.mrb[0].mxu0
  %3882 = vdwg.mxu0
  %3883 = vmatprep.subr.mxu0 0.0
  %3884 = vmatpush1.msra.mxu0 %v76
  %3885 = vmatprep.subr.mxu0 0.0
  %3886 = vmatpush1.msra.mxu0 %v77
  %3887 = vmatprep.subr.mxu0 0.0
  %3888 = vmatpush1.msra.mxu0 %v78
  %3889 = vmatprep.subr.mxu0 0.0
  %3890 = vmatpush1.msra.mxu0 %v79
  %3891 = vmatprep.subr.mxu0 0.0
  %3892 = vmatpush1.msra.mxu0 0.0
  %3893 = vmatprep.subr.mxu0 0.0
  %3894 = vmatpush1.msra.mxu0 0.0
  %3895 = vmatprep.subr.mxu0 0.0
  %3896 = vmatpush1.msra.mxu0 0.0
  %3897 = vmatprep.subr.mxu0 0.0
  %3898 = vmatpush1.msra.mxu0 0.0
  %3899 = vmatprep.subr.mxu0 0.0
  %3900 = vmatpush1.msra.mxu0 0.0
  %3901 = vmatprep.subr.mxu0 0.0
  %3902 = vmatpush1.msra.mxu0 0.0
  %3903 = vmatprep.subr.mxu0 0.0
  %3904 = vmatpush1.msra.mxu0 0.0
  %3905 = vmatprep.subr.mxu0 0.0
  %3906 = vmatpush1.msra.mxu0 0.0
  %3907 = vmatprep.subr.mxu0 0.0
  %3908 = vmatpush1.msra.mxu0 0.0
  %3909 = vmatprep.subr.mxu0 0.0
  %3910 = vmatpush1.msra.mxu0 0.0
  %3911 = vmatprep.subr.mxu0 0.0
  %3912 = vmatpush1.msra.mxu0 0.0
  %3913 = vmatprep.subr.mxu0 0.0
  %3914 = vmatpush1.msra.mxu0 0.0
  %3915 = vmatprep.subr.mxu0 0.0
  %3916 = vmatpush1.msra.mxu0 0.0
  %3917 = vmatprep.subr.mxu0 0.0
  %3918 = vmatpush1.msra.mxu0 0.0
  %3919 = vmatprep.subr.mxu0 0.0
  %3920 = vmatpush1.msra.mxu0 0.0
  %3921 = vmatprep.subr.mxu0 0.0
  %3922 = vmatpush1.msra.mxu0 0.0
  %3923 = vmatprep.subr.mxu0 0.0
  %3924 = vmatpush1.msra.mxu0 0.0
  %3925 = vmatprep.subr.mxu0 0.0
  %3926 = vmatpush1.msra.mxu0 0.0
  %3927 = vmatprep.subr.mxu0 0.0
  %3928 = vmatpush1.msra.mxu0 0.0
  %3929 = vmatprep.subr.mxu0 0.0
  %3930 = vmatpush1.msra.mxu0 0.0
  %3931 = vmatprep.subr.mxu0 0.0
  %3932 = vmatpush1.msra.mxu0 0.0
  %3933 = vmatprep.subr.mxu0 0.0
  %3934 = vmatpush1.msra.mxu0 0.0
  %3935 = vmatprep.subr.mxu0 0.0
  %3936 = vmatpush1.msra.mxu0 0.0
  %3937 = vmatprep.subr.mxu0 0.0
  %3938 = vmatpush1.msra.mxu0 0.0
  %3939 = vmatprep.subr.mxu0 0.0
  %3940 = vmatpush1.msra.mxu0 0.0
  %3941 = vmatprep.subr.mxu0 0.0
  %3942 = vmatpush1.msra.mxu0 0.0
  %3943 = vmatprep.subr.mxu0 0.0
  %3944 = vmatpush1.msra.mxu0 0.0
  %3945 = vmatprep.subr.mxu0 0.0
  %3946 = vmatpush1.msra.mxu0 0.0
  %3947 = vmatprep.mubr.f32.mxu0 0.0
  %3948 = vmatmul.mubr.f32.gmra.mrb[0].mxu0 %v260
  %v3949 = vpop.f32.mrb[0].mxu0
  %v3950 = vadd.f32 0.0, %v3949
  %v3951 = vpop.f32.mrb[0].mxu0
  %3952 = vmatprep.mubr.f32.mxu0 0.0
  %3953 = vmatmul.mubr.f32.gmra.mrb[0].mxu0 %v263
  %v3954 = vpop.f32.mrb[0].mxu0
  %v3955 = vadd.f32 0.0, %v3954
  %v3956 = vpop.f32.mrb[0].mxu0
  %3957 = vdwg.mxu0
  %3958 = vmatprep.subr.mxu0 0.0
  %3959 = vmatpush1.msra.mxu0 %v76
  %3960 = vmatprep.subr.mxu0 0.0
  %3961 = vmatpush1.msra.mxu0 %v77
  %3962 = vmatprep.subr.mxu0 0.0
  %3963 = vmatpush1.msra.mxu0 %v78
  %3964 = vmatprep.subr.mxu0 0.0
  %3965 = vmatpush1.msra.mxu0 %v79
  %3966 = vmatprep.subr.mxu0 0.0
  %3967 = vmatpush1.msra.mxu0 0.0
  %3968 = vmatprep.subr.mxu0 0.0
  %3969 = vmatpush1.msra.mxu0 0.0
  %3970 = vmatprep.subr.mxu0 0.0
  %3971 = vmatpush1.msra.mxu0 0.0
  %3972 = vmatprep.subr.mxu0 0.0
  %3973 = vmatpush1.msra.mxu0 0.0
  %3974 = vmatprep.subr.mxu0 0.0
  %3975 = vmatpush1.msra.mxu0 0.0
  %3976 = vmatprep.subr.mxu0 0.0
  %3977 = vmatpush1.msra.mxu0 0.0
  %3978 = vmatprep.subr.mxu0 0.0
  %3979 = vmatpush1.msra.mxu0 0.0
  %3980 = vmatprep.subr.mxu0 0.0
  %3981 = vmatpush1.msra.mxu0 0.0
  %3982 = vmatprep.subr.mxu0 0.0
  %3983 = vmatpush1.msra.mxu0 0.0
  %3984 = vmatprep.subr.mxu0 0.0
  %3985 = vmatpush1.msra.mxu0 0.0
  %3986 = vmatprep.subr.mxu0 0.0
  %3987 = vmatpush1.msra.mxu0 0.0
  %3988 = vmatprep.subr.mxu0 0.0
  %3989 = vmatpush1.msra.mxu0 0.0
  %3990 = vmatprep.subr.mxu0 0.0
  %3991 = vmatpush1.msra.mxu0 0.0
  %3992 = vmatprep.subr.mxu0 0.0
  %3993 = vmatpush1.msra.mxu0 0.0
  %3994 = vmatprep.subr.mxu0 0.0
  %3995 = vmatpush1.msra.mxu0 0.0
  %3996 = vmatprep.subr.mxu0 0.0
  %3997 = vmatpush1.msra.mxu0 0.0
  %3998 = vmatprep.subr.mxu0 0.0
  %3999 = vmatpush1.msra.mxu0 0.0
  %4000 = vmatprep.subr.mxu0 0.0
  %4001 = vmatpush1.msra.mxu0 0.0
  %4002 = vmatprep.subr.mxu0 0.0
  %4003 = vmatpush1.msra.mxu0 0.0
  %4004 = vmatprep.subr.mxu0 0.0
  %4005 = vmatpush1.msra.mxu0 0.0
  %4006 = vmatprep.subr.mxu0 0.0
  %4007 = vmatpush1.msra.mxu0 0.0
  %4008 = vmatprep.subr.mxu0 0.0
  %4009 = vmatpush1.msra.mxu0 0.0
  %4010 = vmatprep.subr.mxu0 0.0
  %4011 = vmatpush1.msra.mxu0 0.0
  %4012 = vmatprep.subr.mxu0 0.0
  %4013 = vmatpush1.msra.mxu0 0.0
  %4014 = vmatprep.subr.mxu0 0.0
  %4015 = vmatpush1.msra.mxu0 0.0
  %4016 = vmatprep.subr.mxu0 0.0
  %4017 = vmatpush1.msra.mxu0 0.0
  %4018 = vmatprep.subr.mxu0 0.0
  %4019 = vmatpush1.msra.mxu0 0.0
  %4020 = vmatprep.subr.mxu0 0.0
  %4021 = vmatpush1.msra.mxu0 0.0
  %4022 = vmatprep.mubr.f32.mxu0 0.0
  %4023 = vmatmul.mubr.f32.gmra.mrb[0].mxu0 %v341
  %v4024 = vpop.f32.mrb[0].mxu0
  %v4025 = vadd.f32 0.0, %v4024
  %v4026 = vpop.f32.mrb[0].mxu0
  %4027 = vmatprep.mubr.f32.mxu0 0.0
  %4028 = vmatmul.mubr.f32.gmra.mrb[0].mxu0 %v344
  %v4029 = vpop.f32.mrb[0].mxu0
  %v4030 = vadd.f32 0.0, %v4029
  %v4031 = vpop.f32.mrb[0].mxu0
  %4032 = vdwg.mxu0
  %4033 = vmatprep.subr.mxu0 0.0
  %4034 = vmatpush1.msra.mxu0 %v76
  %4035 = vmatprep.subr.mxu0 0.0
  %4036 = vmatpush1.msra.mxu0 %v77
  %4037 = vmatprep.subr.mxu0 0.0
  %4038 = vmatpush1.msra.mxu0 %v78
  %4039 = vmatprep.subr.mxu0 0.0
  %4040 = vmatpush1.msra.mxu0 %v79
  %4041 = vmatprep.subr.mxu0 0.0
  %4042 = vmatpush1.msra.mxu0 0.0
  %4043 = vmatprep.subr.mxu0 0.0
  %4044 = vmatpush1.msra.mxu0 0.0
  %4045 = vmatprep.subr.mxu0 0.0
  %4046 = vmatpush1.msra.mxu0 0.0
  %4047 = vmatprep.subr.mxu0 0.0
  %4048 = vmatpush1.msra.mxu0 0.0
  %4049 = vmatprep.subr.mxu0 0.0
  %4050 = vmatpush1.msra.mxu0 0.0
  %4051 = vmatprep.subr.mxu0 0.0
  %4052 = vmatpush1.msra.mxu0 0.0
  %4053 = vmatprep.subr.mxu0 0.0
  %4054 = vmatpush1.msra.mxu0 0.0
  %4055 = vmatprep.subr.mxu0 0.0
  %4056 = vmatpush1.msra.mxu0 0.0
  %4057 = vmatprep.subr.mxu0 0.0
  %4058 = vmatpush1.msra.mxu0 0.0
  %4059 = vmatprep.subr.mxu0 0.0
  %4060 = vmatpush1.msra.mxu0 0.0
  %4061 = vmatprep.subr.mxu0 0.0
  %4062 = vmatpush1.msra.mxu0 0.0
  %4063 = vmatprep.subr.mxu0 0.0
  %4064 = vmatpush1.msra.mxu0 0.0
  %4065 = vmatprep.subr.mxu0 0.0
  %4066 = vmatpush1.msra.mxu0 0.0
  %4067 = vmatprep.subr.mxu0 0.0
  %4068 = vmatpush1.msra.mxu0 0.0
  %4069 = vmatprep.subr.mxu0 0.0
  %4070 = vmatpush1.msra.mxu0 0.0
  %4071 = vmatprep.subr.mxu0 0.0
  %4072 = vmatpush1.msra.mxu0 0.0
  %4073 = vmatprep.subr.mxu0 0.0
  %4074 = vmatpush1.msra.mxu0 0.0
  %4075 = vmatprep.subr.mxu0 0.0
  %4076 = vmatpush1.msra.mxu0 0.0
  %4077 = vmatprep.subr.mxu0 0.0
  %4078 = vmatpush1.msra.mxu0 0.0
  %4079 = vmatprep.subr.mxu0 0.0
  %4080 = vmatpush1.msra.mxu0 0.0
  %4081 = vmatprep.subr.mxu0 0.0
  %4082 = vmatpush1.msra.mxu0 0.0
  %4083 = vmatprep.subr.mxu0 0.0
  %4084 = vmatpush1.msra.mxu0 0.0
  %4085 = vmatprep.subr.mxu0 0.0
  %4086 = vmatpush1.msra.mxu0 0.0
  %4087 = vmatprep.subr.mxu0 0.0
  %4088 = vmatpush1.msra.mxu0 0.0
  %4089 = vmatprep.subr.mxu0 0.0
  %4090 = vmatpush1.msra.mxu0 0.0
  %4091 = vmatprep.subr.mxu0 0.0
  %4092 = vmatpush1.msra.mxu0 0.0
  %4093 = vmatprep.subr.mxu0 0.0
  %4094 = vmatpush1.msra.mxu0 0.0
  %4095 = vmatprep.subr.mxu0 0.0
  %4096 = vmatpush1.msra.mxu0 0.0
  %4097 = vmatprep.mubr.f32.mxu0 0.0
  %4098 = vmatmul.mubr.f32.gmra.mrb[0].mxu0 %v422
  %v4099 = vpop.f32.mrb[0].mxu0
  %v4100 = vadd.f32 0.0, %v4099
  %v4101 = vpop.f32.mrb[0].mxu0
  %4102 = vmatprep.mubr.f32.mxu0 0.0
  %4103 = vmatmul.mubr.f32.gmra.mrb[0].mxu0 %v425
  %v4104 = vpop.f32.mrb[0].mxu0
  %v4105 = vadd.f32 0.0, %v4104
  %v4106 = vpop.f32.mrb[0].mxu0
  %4107 = vdwg.mxu0
  %4108 = vmatprep.subr.mxu0 0.0
  %4109 = vmatpush1.msra.mxu0 %v76
  %4110 = vmatprep.subr.mxu0 0.0
  %4111 = vmatpush1.msra.mxu0 %v77
  %4112 = vmatprep.subr.mxu0 0.0
  %4113 = vmatpush1.msra.mxu0 %v78
  %4114 = vmatprep.subr.mxu0 0.0
  %4115 = vmatpush1.msra.mxu0 %v79
  %4116 = vmatprep.subr.mxu0 0.0
  %4117 = vmatpush1.msra.mxu0 0.0
  %4118 = vmatprep.subr.mxu0 0.0
  %4119 = vmatpush1.msra.mxu0 0.0
  %4120 = vmatprep.subr.mxu0 0.0
  %4121 = vmatpush1.msra.mxu0 0.0
  %4122 = vmatprep.subr.mxu0 0.0
  %4123 = vmatpush1.msra.mxu0 0.0
  %4124 = vmatprep.subr.mxu0 0.0
  %4125 = vmatpush1.msra.mxu0 0.0
  %4126 = vmatprep.subr.mxu0 0.0
  %4127 = vmatpush1.msra.mxu0 0.0
  %4128 = vmatprep.subr.mxu0 0.0
  %4129 = vmatpush1.msra.mxu0 0.0
  %4130 = vmatprep.subr.mxu0 0.0
  %4131 = vmatpush1.msra.mxu0 0.0
  %4132 = vmatprep.subr.mxu0 0.0
  %4133 = vmatpush1.msra.mxu0 0.0
  %4134 = vmatprep.subr.mxu0 0.0
  %4135 = vmatpush1.msra.mxu0 0.0
  %4136 = vmatprep.subr.mxu0 0.0
  %4137 = vmatpush1.msra.mxu0 0.0
  %4138 = vmatprep.subr.mxu0 0.0
  %4139 = vmatpush1.msra.mxu0 0.0
  %4140 = vmatprep.subr.mxu0 0.0
  %4141 = vmatpush1.msra.mxu0 0.0
  %4142 = vmatprep.subr.mxu0 0.0
  %4143 = vmatpush1.msra.mxu0 0.0
  %4144 = vmatprep.subr.mxu0 0.0
  %4145 = vmatpush1.msra.mxu0 0.0
  %4146 = vmatprep.subr.mxu0 0.0
  %4147 = vmatpush1.msra.mxu0 0.0
  %4148 = vmatprep.subr.mxu0 0.0
  %4149 = vmatpush1.msra.mxu0 0.0
  %4150 = vmatprep.subr.mxu0 0.0
  %4151 = vmatpush1.msra.mxu0 0.0
  %4152 = vmatprep.subr.mxu0 0.0
  %4153 = vmatpush1.msra.mxu0 0.0
  %4154 = vmatprep.subr.mxu0 0.0
  %4155 = vmatpush1.msra.mxu0 0.0
  %4156 = vmatprep.subr.mxu0 0.0
  %4157 = vmatpush1.msra.mxu0 0.0
  %4158 = vmatprep.subr.mxu0 0.0
  %4159 = vmatpush1.msra.mxu0 0.0
  %4160 = vmatprep.subr.mxu0 0.0
  %4161 = vmatpush1.msra.mxu0 0.0
  %4162 = vmatprep.subr.mxu0 0.0
  %4163 = vmatpush1.msra.mxu0 0.0
  %4164 = vmatprep.subr.mxu0 0.0
  %4165 = vmatpush1.msra.mxu0 0.0
  %4166 = vmatprep.subr.mxu0 0.0
  %4167 = vmatpush1.msra.mxu0 0.0
  %4168 = vmatprep.subr.mxu0 0.0
  %4169 = vmatpush1.msra.mxu0 0.0
  %4170 = vmatprep.subr.mxu0 0.0
  %4171 = vmatpush1.msra.mxu0 0.0
  %4172 = vmatprep.mubr.f32.mxu0 0.0
  %4173 = vmatmul.mubr.f32.gmra.mrb[0].mxu0 %v503
  %v4174 = vpop.f32.mrb[0].mxu0
  %v4175 = vadd.f32 0.0, %v4174
  %v4176 = vpop.f32.mrb[0].mxu0
  %4177 = vmatprep.mubr.f32.mxu0 0.0
  %4178 = vmatmul.mubr.f32.gmra.mrb[0].mxu0 %v506
  %v4179 = vpop.f32.mrb[0].mxu0
  %v4180 = vadd.f32 0.0, %v4179
  %v4181 = vpop.f32.mrb[0].mxu0
  %4182 = vdwg.mxu0
  %4183 = vmatprep.subr.mxu0 0.0
  %4184 = vmatpush1.msra.mxu0 %v80
  %4185 = vmatprep.subr.mxu0 0.0
  %4186 = vmatpush1.msra.mxu0 %v81
  %4187 = vmatprep.subr.mxu0 0.0
  %4188 = vmatpush1.msra.mxu0 %v82
  %4189 = vmatprep.subr.mxu0 0.0
  %4190 = vmatpush1.msra.mxu0 %v83
  %4191 = vmatprep.subr.mxu0 0.0
  %4192 = vmatpush1.msra.mxu0 0.0
  %4193 = vmatprep.subr.mxu0 0.0
  %4194 = vmatpush1.msra.mxu0 0.0
  %4195 = vmatprep.subr.mxu0 0.0
  %4196 = vmatpush1.msra.mxu0 0.0
  %4197 = vmatprep.subr.mxu0 0.0
  %4198 = vmatpush1.msra.mxu0 0.0
  %4199 = vmatprep.subr.mxu0 0.0
  %4200 = vmatpush1.msra.mxu0 0.0
  %4201 = vmatprep.subr.mxu0 0.0
  %4202 = vmatpush1.msra.mxu0 0.0
  %4203 = vmatprep.subr.mxu0 0.0
  %4204 = vmatpush1.msra.mxu0 0.0
  %4205 = vmatprep.subr.mxu0 0.0
  %4206 = vmatpush1.msra.mxu0 0.0
  %4207 = vmatprep.subr.mxu0 0.0
  %4208 = vmatpush1.msra.mxu0 0.0
  %4209 = vmatprep.subr.mxu0 0.0
  %4210 = vmatpush1.msra.mxu0 0.0
  %4211 = vmatprep.subr.mxu0 0.0
  %4212 = vmatpush1.msra.mxu0 0.0
  %4213 = vmatprep.subr.mxu0 0.0
  %4214 = vmatpush1.msra.mxu0 0.0
  %4215 = vmatprep.subr.mxu0 0.0
  %4216 = vmatpush1.msra.mxu0 0.0
  %4217 = vmatprep.subr.mxu0 0.0
  %4218 = vmatpush1.msra.mxu0 0.0
  %4219 = vmatprep.subr.mxu0 0.0
  %4220 = vmatpush1.msra.mxu0 0.0
  %4221 = vmatprep.subr.mxu0 0.0
  %4222 = vmatpush1.msra.mxu0 0.0
  %4223 = vmatprep.subr.mxu0 0.0
  %4224 = vmatpush1.msra.mxu0 0.0
  %4225 = vmatprep.subr.mxu0 0.0
  %4226 = vmatpush1.msra.mxu0 0.0
  %4227 = vmatprep.subr.mxu0 0.0
  %4228 = vmatpush1.msra.mxu0 0.0
  %4229 = vmatprep.subr.mxu0 0.0
  %4230 = vmatpush1.msra.mxu0 0.0
  %4231 = vmatprep.subr.mxu0 0.0
  %4232 = vmatpush1.msra.mxu0 0.0
  %4233 = vmatprep.subr.mxu0 0.0
  %4234 = vmatpush1.msra.mxu0 0.0
  %4235 = vmatprep.subr.mxu0 0.0
  %4236 = vmatpush1.msra.mxu0 0.0
  %4237 = vmatprep.subr.mxu0 0.0
  %4238 = vmatpush1.msra.mxu0 0.0
  %4239 = vmatprep.subr.mxu0 0.0
  %4240 = vmatpush1.msra.mxu0 0.0
  %4241 = vmatprep.subr.mxu0 0.0
  %4242 = vmatpush1.msra.mxu0 0.0
  %4243 = vmatprep.subr.mxu0 0.0
  %4244 = vmatpush1.msra.mxu0 0.0
  %4245 = vmatprep.subr.mxu0 0.0
  %4246 = vmatpush1.msra.mxu0 0.0
  %4247 = vmatprep.mubr.f32.mxu0 0.0
  %4248 = vmatmul.mubr.f32.gmra.mrb[0].mxu0 %v98
  %v4249 = vpop.f32.mrb[0].mxu0
  %v4250 = vadd.f32 0.0, %v4249
  %v4251 = vpop.f32.mrb[0].mxu0
  %4252 = vmatprep.mubr.f32.mxu0 0.0
  %4253 = vmatmul.mubr.f32.gmra.mrb[0].mxu0 %v101
  %v4254 = vpop.f32.mrb[0].mxu0
  %v4255 = vadd.f32 0.0, %v4254
  %v4256 = vpop.f32.mrb[0].mxu0
  %4257 = vdwg.mxu0
  %4258 = vmatprep.subr.mxu0 0.0
  %4259 = vmatpush1.msra.mxu0 %v80
  %4260 = vmatprep.subr.mxu0 0.0
  %4261 = vmatpush1.msra.mxu0 %v81
  %4262 = vmatprep.subr.mxu0 0.0
  %4263 = vmatpush1.msra.mxu0 %v82
  %4264 = vmatprep.subr.mxu0 0.0
  %4265 = vmatpush1.msra.mxu0 %v83
  %4266 = vmatprep.subr.mxu0 0.0
  %4267 = vmatpush1.msra.mxu0 0.0
  %4268 = vmatprep.subr.mxu0 0.0
  %4269 = vmatpush1.msra.mxu0 0.0
  %4270 = vmatprep.subr.mxu0 0.0
  %4271 = vmatpush1.msra.mxu0 0.0
  %4272 = vmatprep.subr.mxu0 0.0
  %4273 = vmatpush1.msra.mxu0 0.0
  %4274 = vmatprep.subr.mxu0 0.0
  %4275 = vmatpush1.msra.mxu0 0.0
  %4276 = vmatprep.subr.mxu0 0.0
  %4277 = vmatpush1.msra.mxu0 0.0
  %4278 = vmatprep.subr.mxu0 0.0
  %4279 = vmatpush1.msra.mxu0 0.0
  %4280 = vmatprep.subr.mxu0 0.0
  %4281 = vmatpush1.msra.mxu0 0.0
  %4282 = vmatprep.subr.mxu0 0.0
  %4283 = vmatpush1.msra.mxu0 0.0
  %4284 = vmatprep.subr.mxu0 0.0
  %4285 = vmatpush1.msra.mxu0 0.0
  %4286 = vmatprep.subr.mxu0 0.0
  %4287 = vmatpush1.msra.mxu0 0.0
  %4288 = vmatprep.subr.mxu0 0.0
  %4289 = vmatpush1.msra.mxu0 0.0
  %4290 = vmatprep.subr.mxu0 0.0
  %4291 = vmatpush1.msra.mxu0 0.0
  %4292 = vmatprep.subr.mxu0 0.0
  %4293 = vmatpush1.msra.mxu0 0.0
  %4294 = vmatprep.subr.mxu0 0.0
  %4295 = vmatpush1.msra.mxu0 0.0
  %4296 = vmatprep.subr.mxu0 0.0
  %4297 = vmatpush1.msra.mxu0 0.0
  %4298 = vmatprep.subr.mxu0 0.0
  %4299 = vmatpush1.msra.mxu0 0.0
  %4300 = vmatprep.subr.mxu0 0.0
  %4301 = vmatpush1.msra.mxu0 0.0
  %4302 = vmatprep.subr.mxu0 0.0
  %4303 = vmatpush1.msra.mxu0 0.0
  %4304 = vmatprep.subr.mxu0 0.0
  %4305 = vmatpush1.msra.mxu0 0.0
  %4306 = vmatprep.subr.mxu0 0.0
  %4307 = vmatpush1.msra.mxu0 0.0
  %4308 = vmatprep.subr.mxu0 0.0
  %4309 = vmatpush1.msra.mxu0 0.0
  %4310 = vmatprep.subr.mxu0 0.0
  %4311 = vmatpush1.msra.mxu0 0.0
  %4312 = vmatprep.subr.mxu0 0.0
  %4313 = vmatpush1.msra.mxu0 0.0
  %4314 = vmatprep.subr.mxu0 0.0
  %4315 = vmatpush1.msra.mxu0 0.0
  %4316 = vmatprep.subr.mxu0 0.0
  %4317 = vmatpush1.msra.mxu0 0.0
  %4318 = vmatprep.subr.mxu0 0.0
  %4319 = vmatpush1.msra.mxu0 0.0
  %4320 = vmatprep.subr.mxu0 0.0
  %4321 = vmatpush1.msra.mxu0 0.0
  %4322 = vmatprep.mubr.f32.mxu0 0.0
  %4323 = vmatmul.mubr.f32.gmra.mrb[0].mxu0 %v179
  %v4324 = vpop.f32.mrb[0].mxu0
  %v4325 = vadd.f32 0.0, %v4324
  %v4326 = vpop.f32.mrb[0].mxu0
  %4327 = vmatprep.mubr.f32.mxu0 0.0
  %4328 = vmatmul.mubr.f32.gmra.mrb[0].mxu0 %v182
  %v4329 = vpop.f32.mrb[0].mxu0
  %v4330 = vadd.f32 0.0, %v4329
  %v4331 = vpop.f32.mrb[0].mxu0
  %4332 = vdwg.mxu0
  %4333 = vmatprep.subr.mxu0 0.0
  %4334 = vmatpush1.msra.mxu0 %v80
  %4335 = vmatprep.subr.mxu0 0.0
  %4336 = vmatpush1.msra.mxu0 %v81
  %4337 = vmatprep.subr.mxu0 0.0
  %4338 = vmatpush1.msra.mxu0 %v82
  %4339 = vmatprep.subr.mxu0 0.0
  %4340 = vmatpush1.msra.mxu0 %v83
  %4341 = vmatprep.subr.mxu0 0.0
  %4342 = vmatpush1.msra.mxu0 0.0
  %4343 = vmatprep.subr.mxu0 0.0
  %4344 = vmatpush1.msra.mxu0 0.0
  %4345 = vmatprep.subr.mxu0 0.0
  %4346 = vmatpush1.msra.mxu0 0.0
  %4347 = vmatprep.subr.mxu0 0.0
  %4348 = vmatpush1.msra.mxu0 0.0
  %4349 = vmatprep.subr.mxu0 0.0
  %4350 = vmatpush1.msra.mxu0 0.0
  %4351 = vmatprep.subr.mxu0 0.0
  %4352 = vmatpush1.msra.mxu0 0.0
  %4353 = vmatprep.subr.mxu0 0.0
  %4354 = vmatpush1.msra.mxu0 0.0
  %4355 = vmatprep.subr.mxu0 0.0
  %4356 = vmatpush1.msra.mxu0 0.0
  %4357 = vmatprep.subr.mxu0 0.0
  %4358 = vmatpush1.msra.mxu0 0.0
  %4359 = vmatprep.subr.mxu0 0.0
  %4360 = vmatpush1.msra.mxu0 0.0
  %4361 = vmatprep.subr.mxu0 0.0
  %4362 = vmatpush1.msra.mxu0 0.0
  %4363 = vmatprep.subr.mxu0 0.0
  %4364 = vmatpush1.msra.mxu0 0.0
  %4365 = vmatprep.subr.mxu0 0.0
  %4366 = vmatpush1.msra.mxu0 0.0
  %4367 = vmatprep.subr.mxu0 0.0
  %4368 = vmatpush1.msra.mxu0 0.0
  %4369 = vmatprep.subr.mxu0 0.0
  %4370 = vmatpush1.msra.mxu0 0.0
  %4371 = vmatprep.subr.mxu0 0.0
  %4372 = vmatpush1.msra.mxu0 0.0
  %4373 = vmatprep.subr.mxu0 0.0
  %4374 = vmatpush1.msra.mxu0 0.0
  %4375 = vmatprep.subr.mxu0 0.0
  %4376 = vmatpush1.msra.mxu0 0.0
  %4377 = vmatprep.subr.mxu0 0.0
  %4378 = vmatpush1.msra.mxu0 0.0
  %4379 = vmatprep.subr.mxu0 0.0
  %4380 = vmatpush1.msra.mxu0 0.0
  %4381 = vmatprep.subr.mxu0 0.0
  %4382 = vmatpush1.msra.mxu0 0.0
  %4383 = vmatprep.subr.mxu0 0.0
  %4384 = vmatpush1.msra.mxu0 0.0
  %4385 = vmatprep.subr.mxu0 0.0
  %4386 = vmatpush1.msra.mxu0 0.0
  %4387 = vmatprep.subr.mxu0 0.0
  %4388 = vmatpush1.msra.mxu0 0.0
  %4389 = vmatprep.subr.mxu0 0.0
  %4390 = vmatpush1.msra.mxu0 0.0
  %4391 = vmatprep.subr.mxu0 0.0
  %4392 = vmatpush1.msra.mxu0 0.0
  %4393 = vmatprep.subr.mxu0 0.0
  %4394 = vmatpush1.msra.mxu0 0.0
  %4395 = vmatprep.subr.mxu0 0.0
  %4396 = vmatpush1.msra.mxu0 0.0
  %4397 = vmatprep.mubr.f32.mxu0 0.0
  %4398 = vmatmul.mubr.f32.gmra.mrb[0].mxu0 %v260
  %v4399 = vpop.f32.mrb[0].mxu0
  %v4400 = vadd.f32 0.0, %v4399
  %v4401 = vpop.f32.mrb[0].mxu0
  %4402 = vmatprep.mubr.f32.mxu0 0.0
  %4403 = vmatmul.mubr.f32.gmra.mrb[0].mxu0 %v263
  %v4404 = vpop.f32.mrb[0].mxu0
  %v4405 = vadd.f32 0.0, %v4404
  %v4406 = vpop.f32.mrb[0].mxu0
  %4407 = vdwg.mxu0
  %4408 = vmatprep.subr.mxu0 0.0
  %4409 = vmatpush1.msra.mxu0 %v80
  %4410 = vmatprep.subr.mxu0 0.0
  %4411 = vmatpush1.msra.mxu0 %v81
  %4412 = vmatprep.subr.mxu0 0.0
  %4413 = vmatpush1.msra.mxu0 %v82
  %4414 = vmatprep.subr.mxu0 0.0
  %4415 = vmatpush1.msra.mxu0 %v83
  %4416 = vmatprep.subr.mxu0 0.0
  %4417 = vmatpush1.msra.mxu0 0.0
  %4418 = vmatprep.subr.mxu0 0.0
  %4419 = vmatpush1.msra.mxu0 0.0
  %4420 = vmatprep.subr.mxu0 0.0
  %4421 = vmatpush1.msra.mxu0 0.0
  %4422 = vmatprep.subr.mxu0 0.0
  %4423 = vmatpush1.msra.mxu0 0.0
  %4424 = vmatprep.subr.mxu0 0.0
  %4425 = vmatpush1.msra.mxu0 0.0
  %4426 = vmatprep.subr.mxu0 0.0
  %4427 = vmatpush1.msra.mxu0 0.0
  %4428 = vmatprep.subr.mxu0 0.0
  %4429 = vmatpush1.msra.mxu0 0.0
  %4430 = vmatprep.subr.mxu0 0.0
  %4431 = vmatpush1.msra.mxu0 0.0
  %4432 = vmatprep.subr.mxu0 0.0
  %4433 = vmatpush1.msra.mxu0 0.0
  %4434 = vmatprep.subr.mxu0 0.0
  %4435 = vmatpush1.msra.mxu0 0.0
  %4436 = vmatprep.subr.mxu0 0.0
  %4437 = vmatpush1.msra.mxu0 0.0
  %4438 = vmatprep.subr.mxu0 0.0
  %4439 = vmatpush1.msra.mxu0 0.0
  %4440 = vmatprep.subr.mxu0 0.0
  %4441 = vmatpush1.msra.mxu0 0.0
  %4442 = vmatprep.subr.mxu0 0.0
  %4443 = vmatpush1.msra.mxu0 0.0
  %4444 = vmatprep.subr.mxu0 0.0
  %4445 = vmatpush1.msra.mxu0 0.0
  %4446 = vmatprep.subr.mxu0 0.0
  %4447 = vmatpush1.msra.mxu0 0.0
  %4448 = vmatprep.subr.mxu0 0.0
  %4449 = vmatpush1.msra.mxu0 0.0
  %4450 = vmatprep.subr.mxu0 0.0
  %4451 = vmatpush1.msra.mxu0 0.0
  %4452 = vmatprep.subr.mxu0 0.0
  %4453 = vmatpush1.msra.mxu0 0.0
  %4454 = vmatprep.subr.mxu0 0.0
  %4455 = vmatpush1.msra.mxu0 0.0
  %4456 = vmatprep.subr.mxu0 0.0
  %4457 = vmatpush1.msra.mxu0 0.0
  %4458 = vmatprep.subr.mxu0 0.0
  %4459 = vmatpush1.msra.mxu0 0.0
  %4460 = vmatprep.subr.mxu0 0.0
  %4461 = vmatpush1.msra.mxu0 0.0
  %4462 = vmatprep.subr.mxu0 0.0
  %4463 = vmatpush1.msra.mxu0 0.0
  %4464 = vmatprep.subr.mxu0 0.0
  %4465 = vmatpush1.msra.mxu0 0.0
  %4466 = vmatprep.subr.mxu0 0.0
  %4467 = vmatpush1.msra.mxu0 0.0
  %4468 = vmatprep.subr.mxu0 0.0
  %4469 = vmatpush1.msra.mxu0 0.0
  %4470 = vmatprep.subr.mxu0 0.0
  %4471 = vmatpush1.msra.mxu0 0.0
  %4472 = vmatprep.mubr.f32.mxu0 0.0
  %4473 = vmatmul.mubr.f32.gmra.mrb[0].mxu0 %v341
  %v4474 = vpop.f32.mrb[0].mxu0
  %v4475 = vadd.f32 0.0, %v4474
  %v4476 = vpop.f32.mrb[0].mxu0
  %4477 = vmatprep.mubr.f32.mxu0 0.0
  %4478 = vmatmul.mubr.f32.gmra.mrb[0].mxu0 %v344
  %v4479 = vpop.f32.mrb[0].mxu0
  %v4480 = vadd.f32 0.0, %v4479
  %v4481 = vpop.f32.mrb[0].mxu0
  %4482 = vdwg.mxu0
  %4483 = vmatprep.subr.mxu0 0.0
  %4484 = vmatpush1.msra.mxu0 %v80
  %4485 = vmatprep.subr.mxu0 0.0
  %4486 = vmatpush1.msra.mxu0 %v81
  %4487 = vmatprep.subr.mxu0 0.0
  %4488 = vmatpush1.msra.mxu0 %v82
  %4489 = vmatprep.subr.mxu0 0.0
  %4490 = vmatpush1.msra.mxu0 %v83
  %4491 = vmatprep.subr.mxu0 0.0
  %4492 = vmatpush1.msra.mxu0 0.0
  %4493 = vmatprep.subr.mxu0 0.0
  %4494 = vmatpush1.msra.mxu0 0.0
  %4495 = vmatprep.subr.mxu0 0.0
  %4496 = vmatpush1.msra.mxu0 0.0
  %4497 = vmatprep.subr.mxu0 0.0
  %4498 = vmatpush1.msra.mxu0 0.0
  %4499 = vmatprep.subr.mxu0 0.0
  %4500 = vmatpush1.msra.mxu0 0.0
  %4501 = vmatprep.subr.mxu0 0.0
  %4502 = vmatpush1.msra.mxu0 0.0
  %4503 = vmatprep.subr.mxu0 0.0
  %4504 = vmatpush1.msra.mxu0 0.0
  %4505 = vmatprep.subr.mxu0 0.0
  %4506 = vmatpush1.msra.mxu0 0.0
  %4507 = vmatprep.subr.mxu0 0.0
  %4508 = vmatpush1.msra.mxu0 0.0
  %4509 = vmatprep.subr.mxu0 0.0
  %4510 = vmatpush1.msra.mxu0 0.0
  %4511 = vmatprep.subr.mxu0 0.0
  %4512 = vmatpush1.msra.mxu0 0.0
  %4513 = vmatprep.subr.mxu0 0.0
  %4514 = vmatpush1.msra.mxu0 0.0
  %4515 = vmatprep.subr.mxu0 0.0
  %4516 = vmatpush1.msra.mxu0 0.0
  %4517 = vmatprep.subr.mxu0 0.0
  %4518 = vmatpush1.msra.mxu0 0.0
  %4519 = vmatprep.subr.mxu0 0.0
  %4520 = vmatpush1.msra.mxu0 0.0
  %4521 = vmatprep.subr.mxu0 0.0
  %4522 = vmatpush1.msra.mxu0 0.0
  %4523 = vmatprep.subr.mxu0 0.0
  %4524 = vmatpush1.msra.mxu0 0.0
  %4525 = vmatprep.subr.mxu0 0.0
  %4526 = vmatpush1.msra.mxu0 0.0
  %4527 = vmatprep.subr.mxu0 0.0
  %4528 = vmatpush1.msra.mxu0 0.0
  %4529 = vmatprep.subr.mxu0 0.0
  %4530 = vmatpush1.msra.mxu0 0.0
  %4531 = vmatprep.subr.mxu0 0.0
  %4532 = vmatpush1.msra.mxu0 0.0
  %4533 = vmatprep.subr.mxu0 0.0
  %4534 = vmatpush1.msra.mxu0 0.0
  %4535 = vmatprep.subr.mxu0 0.0
  %4536 = vmatpush1.msra.mxu0 0.0
  %4537 = vmatprep.subr.mxu0 0.0
  %4538 = vmatpush1.msra.mxu0 0.0
  %4539 = vmatprep.subr.mxu0 0.0
  %4540 = vmatpush1.msra.mxu0 0.0
  %4541 = vmatprep.subr.mxu0 0.0
  %4542 = vmatpush1.msra.mxu0 0.0
  %4543 = vmatprep.subr.mxu0 0.0
  %4544 = vmatpush1.msra.mxu0 0.0
  %4545 = vmatprep.subr.mxu0 0.0
  %4546 = vmatpush1.msra.mxu0 0.0
  %4547 = vmatprep.mubr.f32.mxu0 0.0
  %4548 = vmatmul.mubr.f32.gmra.mrb[0].mxu0 %v422
  %v4549 = vpop.f32.mrb[0].mxu0
  %v4550 = vadd.f32 0.0, %v4549
  %v4551 = vpop.f32.mrb[0].mxu0
  %4552 = vmatprep.mubr.f32.mxu0 0.0
  %4553 = vmatmul.mubr.f32.gmra.mrb[0].mxu0 %v425
  %v4554 = vpop.f32.mrb[0].mxu0
  %v4555 = vadd.f32 0.0, %v4554
  %v4556 = vpop.f32.mrb[0].mxu0
  %4557 = vdwg.mxu0
  %4558 = vmatprep.subr.mxu0 0.0
  %4559 = vmatpush1.msra.mxu0 %v80
  %4560 = vmatprep.subr.mxu0 0.0
  %4561 = vmatpush1.msra.mxu0 %v81
  %4562 = vmatprep.subr.mxu0 0.0
  %4563 = vmatpush1.msra.mxu0 %v82
  %4564 = vmatprep.subr.mxu0 0.0
  %4565 = vmatpush1.msra.mxu0 %v83
  %4566 = vmatprep.subr.mxu0 0.0
  %4567 = vmatpush1.msra.mxu0 0.0
  %4568 = vmatprep.subr.mxu0 0.0
  %4569 = vmatpush1.msra.mxu0 0.0
  %4570 = vmatprep.subr.mxu0 0.0
  %4571 = vmatpush1.msra.mxu0 0.0
  %4572 = vmatprep.subr.mxu0 0.0
  %4573 = vmatpush1.msra.mxu0 0.0
  %4574 = vmatprep.subr.mxu0 0.0
  %4575 = vmatpush1.msra.mxu0 0.0
  %4576 = vmatprep.subr.mxu0 0.0
  %4577 = vmatpush1.msra.mxu0 0.0
  %4578 = vmatprep.subr.mxu0 0.0
  %4579 = vmatpush1.msra.mxu0 0.0
  %4580 = vmatprep.subr.mxu0 0.0
  %4581 = vmatpush1.msra.mxu0 0.0
  %4582 = vmatprep.subr.mxu0 0.0
  %4583 = vmatpush1.msra.mxu0 0.0
  %4584 = vmatprep.subr.mxu0 0.0
  %4585 = vmatpush1.msra.mxu0 0.0
  %4586 = vmatprep.subr.mxu0 0.0
  %4587 = vmatpush1.msra.mxu0 0.0
  %4588 = vmatprep.subr.mxu0 0.0
  %4589 = vmatpush1.msra.mxu0 0.0
  %4590 = vmatprep.subr.mxu0 0.0
  %4591 = vmatpush1.msra.mxu0 0.0
  %4592 = vmatprep.subr.mxu0 0.0
  %4593 = vmatpush1.msra.mxu0 0.0
  %4594 = vmatprep.subr.mxu0 0.0
  %4595 = vmatpush1.msra.mxu0 0.0
  %4596 = vmatprep.subr.mxu0 0.0
  %4597 = vmatpush1.msra.mxu0 0.0
  %4598 = vmatprep.subr.mxu0 0.0
  %4599 = vmatpush1.msra.mxu0 0.0
  %4600 = vmatprep.subr.mxu0 0.0
  %4601 = vmatpush1.msra.mxu0 0.0
  %4602 = vmatprep.subr.mxu0 0.0
  %4603 = vmatpush1.msra.mxu0 0.0
  %4604 = vmatprep.subr.mxu0 0.0
  %4605 = vmatpush1.msra.mxu0 0.0
  %4606 = vmatprep.subr.mxu0 0.0
  %4607 = vmatpush1.msra.mxu0 0.0
  %4608 = vmatprep.subr.mxu0 0.0
  %4609 = vmatpush1.msra.mxu0 0.0
  %4610 = vmatprep.subr.mxu0 0.0
  %4611 = vmatpush1.msra.mxu0 0.0
  %4612 = vmatprep.subr.mxu0 0.0
  %4613 = vmatpush1.msra.mxu0 0.0
  %4614 = vmatprep.subr.mxu0 0.0
  %4615 = vmatpush1.msra.mxu0 0.0
  %4616 = vmatprep.subr.mxu0 0.0
  %4617 = vmatpush1.msra.mxu0 0.0
  %4618 = vmatprep.subr.mxu0 0.0
  %4619 = vmatpush1.msra.mxu0 0.0
  %4620 = vmatprep.subr.mxu0 0.0
  %4621 = vmatpush1.msra.mxu0 0.0
  %4622 = vmatprep.mubr.f32.mxu0 0.0
  %4623 = vmatmul.mubr.f32.gmra.mrb[0].mxu0 %v503
  %v4624 = vpop.f32.mrb[0].mxu0
  %v4625 = vadd.f32 0.0, %v4624
  %v4626 = vpop.f32.mrb[0].mxu0
  %4627 = vmatprep.mubr.f32.mxu0 0.0
  %4628 = vmatmul.mubr.f32.gmra.mrb[0].mxu0 %v506
  %v4629 = vpop.f32.mrb[0].mxu0
  %v4630 = vadd.f32 0.0, %v4629
  %v4631 = vpop.f32.mrb[0].mxu0
  %4632 = vdwg.mxu0
  %4633 = vmatprep.subr.mxu0 0.0
  %4634 = vmatpush1.msra.mxu0 %v84
  %4635 = vmatprep.subr.mxu0 0.0
  %4636 = vmatpush1.msra.mxu0 %v85
  %4637 = vmatprep.subr.mxu0 0.0
  %4638 = vmatpush1.msra.mxu0 %v86
  %4639 = vmatprep.subr.mxu0 0.0
  %4640 = vmatpush1.msra.mxu0 %v87
  %4641 = vmatprep.subr.mxu0 0.0
  %4642 = vmatpush1.msra.mxu0 0.0
  %4643 = vmatprep.subr.mxu0 0.0
  %4644 = vmatpush1.msra.mxu0 0.0
  %4645 = vmatprep.subr.mxu0 0.0
  %4646 = vmatpush1.msra.mxu0 0.0
  %4647 = vmatprep.subr.mxu0 0.0
  %4648 = vmatpush1.msra.mxu0 0.0
  %4649 = vmatprep.subr.mxu0 0.0
  %4650 = vmatpush1.msra.mxu0 0.0
  %4651 = vmatprep.subr.mxu0 0.0
  %4652 = vmatpush1.msra.mxu0 0.0
  %4653 = vmatprep.subr.mxu0 0.0
  %4654 = vmatpush1.msra.mxu0 0.0
  %4655 = vmatprep.subr.mxu0 0.0
  %4656 = vmatpush1.msra.mxu0 0.0
  %4657 = vmatprep.subr.mxu0 0.0
  %4658 = vmatpush1.msra.mxu0 0.0
  %4659 = vmatprep.subr.mxu0 0.0
  %4660 = vmatpush1.msra.mxu0 0.0
  %4661 = vmatprep.subr.mxu0 0.0
  %4662 = vmatpush1.msra.mxu0 0.0
  %4663 = vmatprep.subr.mxu0 0.0
  %4664 = vmatpush1.msra.mxu0 0.0
  %4665 = vmatprep.subr.mxu0 0.0
  %4666 = vmatpush1.msra.mxu0 0.0
  %4667 = vmatprep.subr.mxu0 0.0
  %4668 = vmatpush1.msra.mxu0 0.0
  %4669 = vmatprep.subr.mxu0 0.0
  %4670 = vmatpush1.msra.mxu0 0.0
  %4671 = vmatprep.subr.mxu0 0.0
  %4672 = vmatpush1.msra.mxu0 0.0
  %4673 = vmatprep.subr.mxu0 0.0
  %4674 = vmatpush1.msra.mxu0 0.0
  %4675 = vmatprep.subr.mxu0 0.0
  %4676 = vmatpush1.msra.mxu0 0.0
  %4677 = vmatprep.subr.mxu0 0.0
  %4678 = vmatpush1.msra.mxu0 0.0
  %4679 = vmatprep.subr.mxu0 0.0
  %4680 = vmatpush1.msra.mxu0 0.0
  %4681 = vmatprep.subr.mxu0 0.0
  %4682 = vmatpush1.msra.mxu0 0.0
  %4683 = vmatprep.subr.mxu0 0.0
  %4684 = vmatpush1.msra.mxu0 0.0
  %4685 = vmatprep.subr.mxu0 0.0
  %4686 = vmatpush1.msra.mxu0 0.0
  %4687 = vmatprep.subr.mxu0 0.0
  %4688 = vmatpush1.msra.mxu0 0.0
  %4689 = vmatprep.subr.mxu0 0.0
  %4690 = vmatpush1.msra.mxu0 0.0
  %4691 = vmatprep.subr.mxu0 0.0
  %4692 = vmatpush1.msra.mxu0 0.0
  %4693 = vmatprep.subr.mxu0 0.0
  %4694 = vmatpush1.msra.mxu0 0.0
  %4695 = vmatprep.subr.mxu0 0.0
  %4696 = vmatpush1.msra.mxu0 0.0
  %4697 = vmatprep.mubr.f32.mxu0 0.0
  %4698 = vmatmul.mubr.f32.gmra.mrb[0].mxu0 %v98
  %v4699 = vpop.f32.mrb[0].mxu0
  %v4700 = vadd.f32 0.0, %v4699
  %v4701 = vpop.f32.mrb[0].mxu0
  %4702 = vmatprep.mubr.f32.mxu0 0.0
  %4703 = vmatmul.mubr.f32.gmra.mrb[0].mxu0 %v101
  %v4704 = vpop.f32.mrb[0].mxu0
  %v4705 = vadd.f32 0.0, %v4704
  %v4706 = vpop.f32.mrb[0].mxu0
  %4707 = vdwg.mxu0
  %4708 = vmatprep.subr.mxu0 0.0
  %4709 = vmatpush1.msra.mxu0 %v84
  %4710 = vmatprep.subr.mxu0 0.0
  %4711 = vmatpush1.msra.mxu0 %v85
  %4712 = vmatprep.subr.mxu0 0.0
  %4713 = vmatpush1.msra.mxu0 %v86
  %4714 = vmatprep.subr.mxu0 0.0
  %4715 = vmatpush1.msra.mxu0 %v87
  %4716 = vmatprep.subr.mxu0 0.0
  %4717 = vmatpush1.msra.mxu0 0.0
  %4718 = vmatprep.subr.mxu0 0.0
  %4719 = vmatpush1.msra.mxu0 0.0
  %4720 = vmatprep.subr.mxu0 0.0
  %4721 = vmatpush1.msra.mxu0 0.0
  %4722 = vmatprep.subr.mxu0 0.0
  %4723 = vmatpush1.msra.mxu0 0.0
  %4724 = vmatprep.subr.mxu0 0.0
  %4725 = vmatpush1.msra.mxu0 0.0
  %4726 = vmatprep.subr.mxu0 0.0
  %4727 = vmatpush1.msra.mxu0 0.0
  %4728 = vmatprep.subr.mxu0 0.0
  %4729 = vmatpush1.msra.mxu0 0.0
  %4730 = vmatprep.subr.mxu0 0.0
  %4731 = vmatpush1.msra.mxu0 0.0
  %4732 = vmatprep.subr.mxu0 0.0
  %4733 = vmatpush1.msra.mxu0 0.0
  %4734 = vmatprep.subr.mxu0 0.0
  %4735 = vmatpush1.msra.mxu0 0.0
  %4736 = vmatprep.subr.mxu0 0.0
  %4737 = vmatpush1.msra.mxu0 0.0
  %4738 = vmatprep.subr.mxu0 0.0
  %4739 = vmatpush1.msra.mxu0 0.0
  %4740 = vmatprep.subr.mxu0 0.0
  %4741 = vmatpush1.msra.mxu0 0.0
  %4742 = vmatprep.subr.mxu0 0.0
  %4743 = vmatpush1.msra.mxu0 0.0
  %4744 = vmatprep.subr.mxu0 0.0
  %4745 = vmatpush1.msra.mxu0 0.0
  %4746 = vmatprep.subr.mxu0 0.0
  %4747 = vmatpush1.msra.mxu0 0.0
  %4748 = vmatprep.subr.mxu0 0.0
  %4749 = vmatpush1.msra.mxu0 0.0
  %4750 = vmatprep.subr.mxu0 0.0
  %4751 = vmatpush1.msra.mxu0 0.0
  %4752 = vmatprep.subr.mxu0 0.0
  %4753 = vmatpush1.msra.mxu0 0.0
  %4754 = vmatprep.subr.mxu0 0.0
  %4755 = vmatpush1.msra.mxu0 0.0
  %4756 = vmatprep.subr.mxu0 0.0
  %4757 = vmatpush1.msra.mxu0 0.0
  %4758 = vmatprep.subr.mxu0 0.0
  %4759 = vmatpush1.msra.mxu0 0.0
  %4760 = vmatprep.subr.mxu0 0.0
  %4761 = vmatpush1.msra.mxu0 0.0
  %4762 = vmatprep.subr.mxu0 0.0
  %4763 = vmatpush1.msra.mxu0 0.0
  %4764 = vmatprep.subr.mxu0 0.0
  %4765 = vmatpush1.msra.mxu0 0.0
  %4766 = vmatprep.subr.mxu0 0.0
  %4767 = vmatpush1.msra.mxu0 0.0
  %4768 = vmatprep.subr.mxu0 0.0
  %4769 = vmatpush1.msra.mxu0 0.0
  %4770 = vmatprep.subr.mxu0 0.0
  %4771 = vmatpush1.msra.mxu0 0.0
  %4772 = vmatprep.mubr.f32.mxu0 0.0
  %4773 = vmatmul.mubr.f32.gmra.mrb[0].mxu0 %v179
  %v4774 = vpop.f32.mrb[0].mxu0
  %v4775 = vadd.f32 0.0, %v4774
  %v4776 = vpop.f32.mrb[0].mxu0
  %4777 = vmatprep.mubr.f32.mxu0 0.0
  %4778 = vmatmul.mubr.f32.gmra.mrb[0].mxu0 %v182
  %v4779 = vpop.f32.mrb[0].mxu0
  %v4780 = vadd.f32 0.0, %v4779
  %v4781 = vpop.f32.mrb[0].mxu0
  %4782 = vdwg.mxu0
  %4783 = vmatprep.subr.mxu0 0.0
  %4784 = vmatpush1.msra.mxu0 %v84
  %4785 = vmatprep.subr.mxu0 0.0
  %4786 = vmatpush1.msra.mxu0 %v85
  %4787 = vmatprep.subr.mxu0 0.0
  %4788 = vmatpush1.msra.mxu0 %v86
  %4789 = vmatprep.subr.mxu0 0.0
  %4790 = vmatpush1.msra.mxu0 %v87
  %4791 = vmatprep.subr.mxu0 0.0
  %4792 = vmatpush1.msra.mxu0 0.0
  %4793 = vmatprep.subr.mxu0 0.0
  %4794 = vmatpush1.msra.mxu0 0.0
  %4795 = vmatprep.subr.mxu0 0.0
  %4796 = vmatpush1.msra.mxu0 0.0
  %4797 = vmatprep.subr.mxu0 0.0
  %4798 = vmatpush1.msra.mxu0 0.0
  %4799 = vmatprep.subr.mxu0 0.0
  %4800 = vmatpush1.msra.mxu0 0.0
  %4801 = vmatprep.subr.mxu0 0.0
  %4802 = vmatpush1.msra.mxu0 0.0
  %4803 = vmatprep.subr.mxu0 0.0
  %4804 = vmatpush1.msra.mxu0 0.0
  %4805 = vmatprep.subr.mxu0 0.0
  %4806 = vmatpush1.msra.mxu0 0.0
  %4807 = vmatprep.subr.mxu0 0.0
  %4808 = vmatpush1.msra.mxu0 0.0
  %4809 = vmatprep.subr.mxu0 0.0
  %4810 = vmatpush1.msra.mxu0 0.0
  %4811 = vmatprep.subr.mxu0 0.0
  %4812 = vmatpush1.msra.mxu0 0.0
  %4813 = vmatprep.subr.mxu0 0.0
  %4814 = vmatpush1.msra.mxu0 0.0
  %4815 = vmatprep.subr.mxu0 0.0
  %4816 = vmatpush1.msra.mxu0 0.0
  %4817 = vmatprep.subr.mxu0 0.0
  %4818 = vmatpush1.msra.mxu0 0.0
  %4819 = vmatprep.subr.mxu0 0.0
  %4820 = vmatpush1.msra.mxu0 0.0
  %4821 = vmatprep.subr.mxu0 0.0
  %4822 = vmatpush1.msra.mxu0 0.0
  %4823 = vmatprep.subr.mxu0 0.0
  %4824 = vmatpush1.msra.mxu0 0.0
  %4825 = vmatprep.subr.mxu0 0.0
  %4826 = vmatpush1.msra.mxu0 0.0
  %4827 = vmatprep.subr.mxu0 0.0
  %4828 = vmatpush1.msra.mxu0 0.0
  %4829 = vmatprep.subr.mxu0 0.0
  %4830 = vmatpush1.msra.mxu0 0.0
  %4831 = vmatprep.subr.mxu0 0.0
  %4832 = vmatpush1.msra.mxu0 0.0
  %4833 = vmatprep.subr.mxu0 0.0
  %4834 = vmatpush1.msra.mxu0 0.0
  %4835 = vmatprep.subr.mxu0 0.0
  %4836 = vmatpush1.msra.mxu0 0.0
  %4837 = vmatprep.subr.mxu0 0.0
  %4838 = vmatpush1.msra.mxu0 0.0
  %4839 = vmatprep.subr.mxu0 0.0
  %4840 = vmatpush1.msra.mxu0 0.0
  %4841 = vmatprep.subr.mxu0 0.0
  %4842 = vmatpush1.msra.mxu0 0.0
  %4843 = vmatprep.subr.mxu0 0.0
  %4844 = vmatpush1.msra.mxu0 0.0
  %4845 = vmatprep.subr.mxu0 0.0
  %4846 = vmatpush1.msra.mxu0 0.0
  %4847 = vmatprep.mubr.f32.mxu0 0.0
  %4848 = vmatmul.mubr.f32.gmra.mrb[0].mxu0 %v260
  %v4849 = vpop.f32.mrb[0].mxu0
  %v4850 = vadd.f32 0.0, %v4849
  %v4851 = vpop.f32.mrb[0].mxu0
  %4852 = vmatprep.mubr.f32.mxu0 0.0
  %4853 = vmatmul.mubr.f32.gmra.mrb[0].mxu0 %v263
  %v4854 = vpop.f32.mrb[0].mxu0
  %v4855 = vadd.f32 0.0, %v4854
  %v4856 = vpop.f32.mrb[0].mxu0
  %4857 = vdwg.mxu0
  %4858 = vmatprep.subr.mxu0 0.0
  %4859 = vmatpush1.msra.mxu0 %v84
  %4860 = vmatprep.subr.mxu0 0.0
  %4861 = vmatpush1.msra.mxu0 %v85
  %4862 = vmatprep.subr.mxu0 0.0
  %4863 = vmatpush1.msra.mxu0 %v86
  %4864 = vmatprep.subr.mxu0 0.0
  %4865 = vmatpush1.msra.mxu0 %v87
  %4866 = vmatprep.subr.mxu0 0.0
  %4867 = vmatpush1.msra.mxu0 0.0
  %4868 = vmatprep.subr.mxu0 0.0
  %4869 = vmatpush1.msra.mxu0 0.0
  %4870 = vmatprep.subr.mxu0 0.0
  %4871 = vmatpush1.msra.mxu0 0.0
  %4872 = vmatprep.subr.mxu0 0.0
  %4873 = vmatpush1.msra.mxu0 0.0
  %4874 = vmatprep.subr.mxu0 0.0
  %4875 = vmatpush1.msra.mxu0 0.0
  %4876 = vmatprep.subr.mxu0 0.0
  %4877 = vmatpush1.msra.mxu0 0.0
  %4878 = vmatprep.subr.mxu0 0.0
  %4879 = vmatpush1.msra.mxu0 0.0
  %4880 = vmatprep.subr.mxu0 0.0
  %4881 = vmatpush1.msra.mxu0 0.0
  %4882 = vmatprep.subr.mxu0 0.0
  %4883 = vmatpush1.msra.mxu0 0.0
  %4884 = vmatprep.subr.mxu0 0.0
  %4885 = vmatpush1.msra.mxu0 0.0
  %4886 = vmatprep.subr.mxu0 0.0
  %4887 = vmatpush1.msra.mxu0 0.0
  %4888 = vmatprep.subr.mxu0 0.0
  %4889 = vmatpush1.msra.mxu0 0.0
  %4890 = vmatprep.subr.mxu0 0.0
  %4891 = vmatpush1.msra.mxu0 0.0
  %4892 = vmatprep.subr.mxu0 0.0
  %4893 = vmatpush1.msra.mxu0 0.0
  %4894 = vmatprep.subr.mxu0 0.0
  %4895 = vmatpush1.msra.mxu0 0.0
  %4896 = vmatprep.subr.mxu0 0.0
  %4897 = vmatpush1.msra.mxu0 0.0
  %4898 = vmatprep.subr.mxu0 0.0
  %4899 = vmatpush1.msra.mxu0 0.0
  %4900 = vmatprep.subr.mxu0 0.0
  %4901 = vmatpush1.msra.mxu0 0.0
  %4902 = vmatprep.subr.mxu0 0.0
  %4903 = vmatpush1.msra.mxu0 0.0
  %4904 = vmatprep.subr.mxu0 0.0
  %4905 = vmatpush1.msra.mxu0 0.0
  %4906 = vmatprep.subr.mxu0 0.0
  %4907 = vmatpush1.msra.mxu0 0.0
  %4908 = vmatprep.subr.mxu0 0.0
  %4909 = vmatpush1.msra.mxu0 0.0
  %4910 = vmatprep.subr.mxu0 0.0
  %4911 = vmatpush1.msra.mxu0 0.0
  %4912 = vmatprep.subr.mxu0 0.0
  %4913 = vmatpush1.msra.mxu0 0.0
  %4914 = vmatprep.subr.mxu0 0.0
  %4915 = vmatpush1.msra.mxu0 0.0
  %4916 = vmatprep.subr.mxu0 0.0
  %4917 = vmatpush1.msra.mxu0 0.0
  %4918 = vmatprep.subr.mxu0 0.0
  %4919 = vmatpush1.msra.mxu0 0.0
  %4920 = vmatprep.subr.mxu0 0.0
  %4921 = vmatpush1.msra.mxu0 0.0
  %4922 = vmatprep.mubr.f32.mxu0 0.0
  %4923 = vmatmul.mubr.f32.gmra.mrb[0].mxu0 %v341
  %v4924 = vpop.f32.mrb[0].mxu0
  %v4925 = vadd.f32 0.0, %v4924
  %v4926 = vpop.f32.mrb[0].mxu0
  %4927 = vmatprep.mubr.f32.mxu0 0.0
  %4928 = vmatmul.mubr.f32.gmra.mrb[0].mxu0 %v344
  %v4929 = vpop.f32.mrb[0].mxu0
  %v4930 = vadd.f32 0.0, %v4929
  %v4931 = vpop.f32.mrb[0].mxu0
  %4932 = vdwg.mxu0
  %4933 = vmatprep.subr.mxu0 0.0
  %4934 = vmatpush1.msra.mxu0 %v84
  %4935 = vmatprep.subr.mxu0 0.0
  %4936 = vmatpush1.msra.mxu0 %v85
  %4937 = vmatprep.subr.mxu0 0.0
  %4938 = vmatpush1.msra.mxu0 %v86
  %4939 = vmatprep.subr.mxu0 0.0
  %4940 = vmatpush1.msra.mxu0 %v87
  %4941 = vmatprep.subr.mxu0 0.0
  %4942 = vmatpush1.msra.mxu0 0.0
  %4943 = vmatprep.subr.mxu0 0.0
  %4944 = vmatpush1.msra.mxu0 0.0
  %4945 = vmatprep.subr.mxu0 0.0
  %4946 = vmatpush1.msra.mxu0 0.0
  %4947 = vmatprep.subr.mxu0 0.0
  %4948 = vmatpush1.msra.mxu0 0.0
  %4949 = vmatprep.subr.mxu0 0.0
  %4950 = vmatpush1.msra.mxu0 0.0
  %4951 = vmatprep.subr.mxu0 0.0
  %4952 = vmatpush1.msra.mxu0 0.0
  %4953 = vmatprep.subr.mxu0 0.0
  %4954 = vmatpush1.msra.mxu0 0.0
  %4955 = vmatprep.subr.mxu0 0.0
  %4956 = vmatpush1.msra.mxu0 0.0
  %4957 = vmatprep.subr.mxu0 0.0
  %4958 = vmatpush1.msra.mxu0 0.0
  %4959 = vmatprep.subr.mxu0 0.0
  %4960 = vmatpush1.msra.mxu0 0.0
  %4961 = vmatprep.subr.mxu0 0.0
  %4962 = vmatpush1.msra.mxu0 0.0
  %4963 = vmatprep.subr.mxu0 0.0
  %4964 = vmatpush1.msra.mxu0 0.0
  %4965 = vmatprep.subr.mxu0 0.0
  %4966 = vmatpush1.msra.mxu0 0.0
  %4967 = vmatprep.subr.mxu0 0.0
  %4968 = vmatpush1.msra.mxu0 0.0
  %4969 = vmatprep.subr.mxu0 0.0
  %4970 = vmatpush1.msra.mxu0 0.0
  %4971 = vmatprep.subr.mxu0 0.0
  %4972 = vmatpush1.msra.mxu0 0.0
  %4973 = vmatprep.subr.mxu0 0.0
  %4974 = vmatpush1.msra.mxu0 0.0
  %4975 = vmatprep.subr.mxu0 0.0
  %4976 = vmatpush1.msra.mxu0 0.0
  %4977 = vmatprep.subr.mxu0 0.0
  %4978 = vmatpush1.msra.mxu0 0.0
  %4979 = vmatprep.subr.mxu0 0.0
  %4980 = vmatpush1.msra.mxu0 0.0
  %4981 = vmatprep.subr.mxu0 0.0
  %4982 = vmatpush1.msra.mxu0 0.0
  %4983 = vmatprep.subr.mxu0 0.0
  %4984 = vmatpush1.msra.mxu0 0.0
  %4985 = vmatprep.subr.mxu0 0.0
  %4986 = vmatpush1.msra.mxu0 0.0
  %4987 = vmatprep.subr.mxu0 0.0
  %4988 = vmatpush1.msra.mxu0 0.0
  %4989 = vmatprep.subr.mxu0 0.0
  %4990 = vmatpush1.msra.mxu0 0.0
  %4991 = vmatprep.subr.mxu0 0.0
  %4992 = vmatpush1.msra.mxu0 0.0
  %4993 = vmatprep.subr.mxu0 0.0
  %4994 = vmatpush1.msra.mxu0 0.0
  %4995 = vmatprep.subr.mxu0 0.0
  %4996 = vmatpush1.msra.mxu0 0.0
  %4997 = vmatprep.mubr.f32.mxu0 0.0
  %4998 = vmatmul.mubr.f32.gmra.mrb[0].mxu0 %v422
  %v4999 = vpop.f32.mrb[0].mxu0
  %v5000 = vadd.f32 0.0, %v4999
  %v5001 = vpop.f32.mrb[0].mxu0
  %5002 = vmatprep.mubr.f32.mxu0 0.0
  %5003 = vmatmul.mubr.f32.gmra.mrb[0].mxu0 %v425
  %v5004 = vpop.f32.mrb[0].mxu0
  %v5005 = vadd.f32 0.0, %v5004
  %v5006 = vpop.f32.mrb[0].mxu0
  %5007 = vdwg.mxu0
  %5008 = vmatprep.subr.mxu0 0.0
  %5009 = vmatpush1.msra.mxu0 %v84
  %5010 = vmatprep.subr.mxu0 0.0
  %5011 = vmatpush1.msra.mxu0 %v85
  %5012 = vmatprep.subr.mxu0 0.0
  %5013 = vmatpush1.msra.mxu0 %v86
  %5014 = vmatprep.subr.mxu0 0.0
  %5015 = vmatpush1.msra.mxu0 %v87
  %5016 = vmatprep.subr.mxu0 0.0
  %5017 = vmatpush1.msra.mxu0 0.0
  %5018 = vmatprep.subr.mxu0 0.0
  %5019 = vmatpush1.msra.mxu0 0.0
  %5020 = vmatprep.subr.mxu0 0.0
  %5021 = vmatpush1.msra.mxu0 0.0
  %5022 = vmatprep.subr.mxu0 0.0
  %5023 = vmatpush1.msra.mxu0 0.0
  %5024 = vmatprep.subr.mxu0 0.0
  %5025 = vmatpush1.msra.mxu0 0.0
  %5026 = vmatprep.subr.mxu0 0.0
  %5027 = vmatpush1.msra.mxu0 0.0
  %5028 = vmatprep.subr.mxu0 0.0
  %5029 = vmatpush1.msra.mxu0 0.0
  %5030 = vmatprep.subr.mxu0 0.0
  %5031 = vmatpush1.msra.mxu0 0.0
  %5032 = vmatprep.subr.mxu0 0.0
  %5033 = vmatpush1.msra.mxu0 0.0
  %5034 = vmatprep.subr.mxu0 0.0
  %5035 = vmatpush1.msra.mxu0 0.0
  %5036 = vmatprep.subr.mxu0 0.0
  %5037 = vmatpush1.msra.mxu0 0.0
  %5038 = vmatprep.subr.mxu0 0.0
  %5039 = vmatpush1.msra.mxu0 0.0
  %5040 = vmatprep.subr.mxu0 0.0
  %5041 = vmatpush1.msra.mxu0 0.0
  %5042 = vmatprep.subr.mxu0 0.0
  %5043 = vmatpush1.msra.mxu0 0.0
  %5044 = vmatprep.subr.mxu0 0.0
  %5045 = vmatpush1.msra.mxu0 0.0
  %5046 = vmatprep.subr.mxu0 0.0
  %5047 = vmatpush1.msra.mxu0 0.0
  %5048 = vmatprep.subr.mxu0 0.0
  %5049 = vmatpush1.msra.mxu0 0.0
  %5050 = vmatprep.subr.mxu0 0.0
  %5051 = vmatpush1.msra.mxu0 0.0
  %5052 = vmatprep.subr.mxu0 0.0
  %5053 = vmatpush1.msra.mxu0 0.0
  %5054 = vmatprep.subr.mxu0 0.0
  %5055 = vmatpush1.msra.mxu0 0.0
  %5056 = vmatprep.subr.mxu0 0.0
  %5057 = vmatpush1.msra.mxu0 0.0
  %5058 = vmatprep.subr.mxu0 0.0
  %5059 = vmatpush1.msra.mxu0 0.0
  %5060 = vmatprep.subr.mxu0 0.0
  %5061 = vmatpush1.msra.mxu0 0.0
  %5062 = vmatprep.subr.mxu0 0.0
  %5063 = vmatpush1.msra.mxu0 0.0
  %5064 = vmatprep.subr.mxu0 0.0
  %5065 = vmatpush1.msra.mxu0 0.0
  %5066 = vmatprep.subr.mxu0 0.0
  %5067 = vmatpush1.msra.mxu0 0.0
  %5068 = vmatprep.subr.mxu0 0.0
  %5069 = vmatpush1.msra.mxu0 0.0
  %5070 = vmatprep.subr.mxu0 0.0
  %5071 = vmatpush1.msra.mxu0 0.0
  %5072 = vmatprep.mubr.f32.mxu0 0.0
  %5073 = vmatmul.mubr.f32.gmra.mrb[0].mxu0 %v503
  %v5074 = vpop.f32.mrb[0].mxu0
  %v5075 = vadd.f32 0.0, %v5074
  %v5076 = vpop.f32.mrb[0].mxu0
  %5077 = vmatprep.mubr.f32.mxu0 0.0
  %5078 = vmatmul.mubr.f32.gmra.mrb[0].mxu0 %v506
  %v5079 = vpop.f32.mrb[0].mxu0
  %v5080 = vadd.f32 0.0, %v5079
  %v5081 = vpop.f32.mrb[0].mxu0
  %5082 = vdwg.mxu0
  %5083 = vmatprep.subr.mxu0 0.0
  %5084 = vmatpush1.msra.mxu0 %v88
  %5085 = vmatprep.subr.mxu0 0.0
  %5086 = vmatpush1.msra.mxu0 %v89
  %5087 = vmatprep.subr.mxu0 0.0
  %5088 = vmatpush1.msra.mxu0 %v90
  %5089 = vmatprep.subr.mxu0 0.0
  %5090 = vmatpush1.msra.mxu0 %v91
  %5091 = vmatprep.subr.mxu0 0.0
  %5092 = vmatpush1.msra.mxu0 0.0
  %5093 = vmatprep.subr.mxu0 0.0
  %5094 = vmatpush1.msra.mxu0 0.0
  %5095 = vmatprep.subr.mxu0 0.0
  %5096 = vmatpush1.msra.mxu0 0.0
  %5097 = vmatprep.subr.mxu0 0.0
  %5098 = vmatpush1.msra.mxu0 0.0
  %5099 = vmatprep.subr.mxu0 0.0
  %5100 = vmatpush1.msra.mxu0 0.0
  %5101 = vmatprep.subr.mxu0 0.0
  %5102 = vmatpush1.msra.mxu0 0.0
  %5103 = vmatprep.subr.mxu0 0.0
  %5104 = vmatpush1.msra.mxu0 0.0
  %5105 = vmatprep.subr.mxu0 0.0
  %5106 = vmatpush1.msra.mxu0 0.0
  %5107 = vmatprep.subr.mxu0 0.0
  %5108 = vmatpush1.msra.mxu0 0.0
  %5109 = vmatprep.subr.mxu0 0.0
  %5110 = vmatpush1.msra.mxu0 0.0
  %5111 = vmatprep.subr.mxu0 0.0
  %5112 = vmatpush1.msra.mxu0 0.0
  %5113 = vmatprep.subr.mxu0 0.0
  %5114 = vmatpush1.msra.mxu0 0.0
  %5115 = vmatprep.subr.mxu0 0.0
  %5116 = vmatpush1.msra.mxu0 0.0
  %5117 = vmatprep.subr.mxu0 0.0
  %5118 = vmatpush1.msra.mxu0 0.0
  %5119 = vmatprep.subr.mxu0 0.0
  %5120 = vmatpush1.msra.mxu0 0.0
  %5121 = vmatprep.subr.mxu0 0.0
  %5122 = vmatpush1.msra.mxu0 0.0
  %5123 = vmatprep.subr.mxu0 0.0
  %5124 = vmatpush1.msra.mxu0 0.0
  %5125 = vmatprep.subr.mxu0 0.0
  %5126 = vmatpush1.msra.mxu0 0.0
  %5127 = vmatprep.subr.mxu0 0.0
  %5128 = vmatpush1.msra.mxu0 0.0
  %5129 = vmatprep.subr.mxu0 0.0
  %5130 = vmatpush1.msra.mxu0 0.0
  %5131 = vmatprep.subr.mxu0 0.0
  %5132 = vmatpush1.msra.mxu0 0.0
  %5133 = vmatprep.subr.mxu0 0.0
  %5134 = vmatpush1.msra.mxu0 0.0
  %5135 = vmatprep.subr.mxu0 0.0
  %5136 = vmatpush1.msra.mxu0 0.0
  %5137 = vmatprep.subr.mxu0 0.0
  %5138 = vmatpush1.msra.mxu0 0.0
  %5139 = vmatprep.subr.mxu0 0.0
  %5140 = vmatpush1.msra.mxu0 0.0
  %5141 = vmatprep.subr.mxu0 0.0
  %5142 = vmatpush1.msra.mxu0 0.0
  %5143 = vmatprep.subr.mxu0 0.0
  %5144 = vmatpush1.msra.mxu0 0.0
  %5145 = vmatprep.subr.mxu0 0.0
  %5146 = vmatpush1.msra.mxu0 0.0
  %5147 = vmatprep.mubr.f32.mxu0 0.0
  %5148 = vmatmul.mubr.f32.gmra.mrb[0].mxu0 %v98
  %v5149 = vpop.f32.mrb[0].mxu0
  %v5150 = vadd.f32 0.0, %v5149
  %v5151 = vpop.f32.mrb[0].mxu0
  %5152 = vmatprep.mubr.f32.mxu0 0.0
  %5153 = vmatmul.mubr.f32.gmra.mrb[0].mxu0 %v101
  %v5154 = vpop.f32.mrb[0].mxu0
  %v5155 = vadd.f32 0.0, %v5154
  %v5156 = vpop.f32.mrb[0].mxu0
  %5157 = vdwg.mxu0
  %5158 = vmatprep.subr.mxu0 0.0
  %5159 = vmatpush1.msra.mxu0 %v88
  %5160 = vmatprep.subr.mxu0 0.0
  %5161 = vmatpush1.msra.mxu0 %v89
  %5162 = vmatprep.subr.mxu0 0.0
  %5163 = vmatpush1.msra.mxu0 %v90
  %5164 = vmatprep.subr.mxu0 0.0
  %5165 = vmatpush1.msra.mxu0 %v91
  %5166 = vmatprep.subr.mxu0 0.0
  %5167 = vmatpush1.msra.mxu0 0.0
  %5168 = vmatprep.subr.mxu0 0.0
  %5169 = vmatpush1.msra.mxu0 0.0
  %5170 = vmatprep.subr.mxu0 0.0
  %5171 = vmatpush1.msra.mxu0 0.0
  %5172 = vmatprep.subr.mxu0 0.0
  %5173 = vmatpush1.msra.mxu0 0.0
  %5174 = vmatprep.subr.mxu0 0.0
  %5175 = vmatpush1.msra.mxu0 0.0
  %5176 = vmatprep.subr.mxu0 0.0
  %5177 = vmatpush1.msra.mxu0 0.0
  %5178 = vmatprep.subr.mxu0 0.0
  %5179 = vmatpush1.msra.mxu0 0.0
  %5180 = vmatprep.subr.mxu0 0.0
  %5181 = vmatpush1.msra.mxu0 0.0
  %5182 = vmatprep.subr.mxu0 0.0
  %5183 = vmatpush1.msra.mxu0 0.0
  %5184 = vmatprep.subr.mxu0 0.0
  %5185 = vmatpush1.msra.mxu0 0.0
  %5186 = vmatprep.subr.mxu0 0.0
  %5187 = vmatpush1.msra.mxu0 0.0
  %5188 = vmatprep.subr.mxu0 0.0
  %5189 = vmatpush1.msra.mxu0 0.0
  %5190 = vmatprep.subr.mxu0 0.0
  %5191 = vmatpush1.msra.mxu0 0.0
  %5192 = vmatprep.subr.mxu0 0.0
  %5193 = vmatpush1.msra.mxu0 0.0
  %5194 = vmatprep.subr.mxu0 0.0
  %5195 = vmatpush1.msra.mxu0 0.0
  %5196 = vmatprep.subr.mxu0 0.0
  %5197 = vmatpush1.msra.mxu0 0.0
  %5198 = vmatprep.subr.mxu0 0.0
  %5199 = vmatpush1.msra.mxu0 0.0
  %5200 = vmatprep.subr.mxu0 0.0
  %5201 = vmatpush1.msra.mxu0 0.0
  %5202 = vmatprep.subr.mxu0 0.0
  %5203 = vmatpush1.msra.mxu0 0.0
  %5204 = vmatprep.subr.mxu0 0.0
  %5205 = vmatpush1.msra.mxu0 0.0
  %5206 = vmatprep.subr.mxu0 0.0
  %5207 = vmatpush1.msra.mxu0 0.0
  %5208 = vmatprep.subr.mxu0 0.0
  %5209 = vmatpush1.msra.mxu0 0.0
  %5210 = vmatprep.subr.mxu0 0.0
  %5211 = vmatpush1.msra.mxu0 0.0
  %5212 = vmatprep.subr.mxu0 0.0
  %5213 = vmatpush1.msra.mxu0 0.0
  %5214 = vmatprep.subr.mxu0 0.0
  %5215 = vmatpush1.msra.mxu0 0.0
  %5216 = vmatprep.subr.mxu0 0.0
  %5217 = vmatpush1.msra.mxu0 0.0
  %5218 = vmatprep.subr.mxu0 0.0
  %5219 = vmatpush1.msra.mxu0 0.0
  %5220 = vmatprep.subr.mxu0 0.0
  %5221 = vmatpush1.msra.mxu0 0.0
  %5222 = vmatprep.mubr.f32.mxu0 0.0
  %5223 = vmatmul.mubr.f32.gmra.mrb[0].mxu0 %v179
  %v5224 = vpop.f32.mrb[0].mxu0
  %v5225 = vadd.f32 0.0, %v5224
  %v5226 = vpop.f32.mrb[0].mxu0
  %5227 = vmatprep.mubr.f32.mxu0 0.0
  %5228 = vmatmul.mubr.f32.gmra.mrb[0].mxu0 %v182
  %v5229 = vpop.f32.mrb[0].mxu0
  %v5230 = vadd.f32 0.0, %v5229
  %v5231 = vpop.f32.mrb[0].mxu0
  %5232 = vdwg.mxu0
  %5233 = vmatprep.subr.mxu0 0.0
  %5234 = vmatpush1.msra.mxu0 %v88
  %5235 = vmatprep.subr.mxu0 0.0
  %5236 = vmatpush1.msra.mxu0 %v89
  %5237 = vmatprep.subr.mxu0 0.0
  %5238 = vmatpush1.msra.mxu0 %v90
  %5239 = vmatprep.subr.mxu0 0.0
  %5240 = vmatpush1.msra.mxu0 %v91
  %5241 = vmatprep.subr.mxu0 0.0
  %5242 = vmatpush1.msra.mxu0 0.0
  %5243 = vmatprep.subr.mxu0 0.0
  %5244 = vmatpush1.msra.mxu0 0.0
  %5245 = vmatprep.subr.mxu0 0.0
  %5246 = vmatpush1.msra.mxu0 0.0
  %5247 = vmatprep.subr.mxu0 0.0
  %5248 = vmatpush1.msra.mxu0 0.0
  %5249 = vmatprep.subr.mxu0 0.0
  %5250 = vmatpush1.msra.mxu0 0.0
  %5251 = vmatprep.subr.mxu0 0.0
  %5252 = vmatpush1.msra.mxu0 0.0
  %5253 = vmatprep.subr.mxu0 0.0
  %5254 = vmatpush1.msra.mxu0 0.0
  %5255 = vmatprep.subr.mxu0 0.0
  %5256 = vmatpush1.msra.mxu0 0.0
  %5257 = vmatprep.subr.mxu0 0.0
  %5258 = vmatpush1.msra.mxu0 0.0
  %5259 = vmatprep.subr.mxu0 0.0
  %5260 = vmatpush1.msra.mxu0 0.0
  %5261 = vmatprep.subr.mxu0 0.0
  %5262 = vmatpush1.msra.mxu0 0.0
  %5263 = vmatprep.subr.mxu0 0.0
  %5264 = vmatpush1.msra.mxu0 0.0
  %5265 = vmatprep.subr.mxu0 0.0
  %5266 = vmatpush1.msra.mxu0 0.0
  %5267 = vmatprep.subr.mxu0 0.0
  %5268 = vmatpush1.msra.mxu0 0.0
  %5269 = vmatprep.subr.mxu0 0.0
  %5270 = vmatpush1.msra.mxu0 0.0
  %5271 = vmatprep.subr.mxu0 0.0
  %5272 = vmatpush1.msra.mxu0 0.0
  %5273 = vmatprep.subr.mxu0 0.0
  %5274 = vmatpush1.msra.mxu0 0.0
  %5275 = vmatprep.subr.mxu0 0.0
  %5276 = vmatpush1.msra.mxu0 0.0
  %5277 = vmatprep.subr.mxu0 0.0
  %5278 = vmatpush1.msra.mxu0 0.0
  %5279 = vmatprep.subr.mxu0 0.0
  %5280 = vmatpush1.msra.mxu0 0.0
  %5281 = vmatprep.subr.mxu0 0.0
  %5282 = vmatpush1.msra.mxu0 0.0
  %5283 = vmatprep.subr.mxu0 0.0
  %5284 = vmatpush1.msra.mxu0 0.0
  %5285 = vmatprep.subr.mxu0 0.0
  %5286 = vmatpush1.msra.mxu0 0.0
  %5287 = vmatprep.subr.mxu0 0.0
  %5288 = vmatpush1.msra.mxu0 0.0
  %5289 = vmatprep.subr.mxu0 0.0
  %5290 = vmatpush1.msra.mxu0 0.0
  %5291 = vmatprep.subr.mxu0 0.0
  %5292 = vmatpush1.msra.mxu0 0.0
  %5293 = vmatprep.subr.mxu0 0.0
  %5294 = vmatpush1.msra.mxu0 0.0
  %5295 = vmatprep.subr.mxu0 0.0
  %5296 = vmatpush1.msra.mxu0 0.0
  %5297 = vmatprep.mubr.f32.mxu0 0.0
  %5298 = vmatmul.mubr.f32.gmra.mrb[0].mxu0 %v260
  %v5299 = vpop.f32.mrb[0].mxu0
  %v5300 = vadd.f32 0.0, %v5299
  %v5301 = vpop.f32.mrb[0].mxu0
  %5302 = vmatprep.mubr.f32.mxu0 0.0
  %5303 = vmatmul.mubr.f32.gmra.mrb[0].mxu0 %v263
  %v5304 = vpop.f32.mrb[0].mxu0
  %v5305 = vadd.f32 0.0, %v5304
  %v5306 = vpop.f32.mrb[0].mxu0
  %5307 = vdwg.mxu0
  %5308 = vmatprep.subr.mxu0 0.0
  %5309 = vmatpush1.msra.mxu0 %v88
  %5310 = vmatprep.subr.mxu0 0.0
  %5311 = vmatpush1.msra.mxu0 %v89
  %5312 = vmatprep.subr.mxu0 0.0
  %5313 = vmatpush1.msra.mxu0 %v90
  %5314 = vmatprep.subr.mxu0 0.0
  %5315 = vmatpush1.msra.mxu0 %v91
  %5316 = vmatprep.subr.mxu0 0.0
  %5317 = vmatpush1.msra.mxu0 0.0
  %5318 = vmatprep.subr.mxu0 0.0
  %5319 = vmatpush1.msra.mxu0 0.0
  %5320 = vmatprep.subr.mxu0 0.0
  %5321 = vmatpush1.msra.mxu0 0.0
  %5322 = vmatprep.subr.mxu0 0.0
  %5323 = vmatpush1.msra.mxu0 0.0
  %5324 = vmatprep.subr.mxu0 0.0
  %5325 = vmatpush1.msra.mxu0 0.0
  %5326 = vmatprep.subr.mxu0 0.0
  %5327 = vmatpush1.msra.mxu0 0.0
  %5328 = vmatprep.subr.mxu0 0.0
  %5329 = vmatpush1.msra.mxu0 0.0
  %5330 = vmatprep.subr.mxu0 0.0
  %5331 = vmatpush1.msra.mxu0 0.0
  %5332 = vmatprep.subr.mxu0 0.0
  %5333 = vmatpush1.msra.mxu0 0.0
  %5334 = vmatprep.subr.mxu0 0.0
  %5335 = vmatpush1.msra.mxu0 0.0
  %5336 = vmatprep.subr.mxu0 0.0
  %5337 = vmatpush1.msra.mxu0 0.0
  %5338 = vmatprep.subr.mxu0 0.0
  %5339 = vmatpush1.msra.mxu0 0.0
  %5340 = vmatprep.subr.mxu0 0.0
  %5341 = vmatpush1.msra.mxu0 0.0
  %5342 = vmatprep.subr.mxu0 0.0
  %5343 = vmatpush1.msra.mxu0 0.0
  %5344 = vmatprep.subr.mxu0 0.0
  %5345 = vmatpush1.msra.mxu0 0.0
  %5346 = vmatprep.subr.mxu0 0.0
  %5347 = vmatpush1.msra.mxu0 0.0
  %5348 = vmatprep.subr.mxu0 0.0
  %5349 = vmatpush1.msra.mxu0 0.0
  %5350 = vmatprep.subr.mxu0 0.0
  %5351 = vmatpush1.msra.mxu0 0.0
  %5352 = vmatprep.subr.mxu0 0.0
  %5353 = vmatpush1.msra.mxu0 0.0
  %5354 = vmatprep.subr.mxu0 0.0
  %5355 = vmatpush1.msra.mxu0 0.0
  %5356 = vmatprep.subr.mxu0 0.0
  %5357 = vmatpush1.msra.mxu0 0.0
  %5358 = vmatprep.subr.mxu0 0.0
  %5359 = vmatpush1.msra.mxu0 0.0
  %5360 = vmatprep.subr.mxu0 0.0
  %5361 = vmatpush1.msra.mxu0 0.0
  %5362 = vmatprep.subr.mxu0 0.0
  %5363 = vmatpush1.msra.mxu0 0.0
  %5364 = vmatprep.subr.mxu0 0.0
  %5365 = vmatpush1.msra.mxu0 0.0
  %5366 = vmatprep.subr.mxu0 0.0
  %5367 = vmatpush1.msra.mxu0 0.0
  %5368 = vmatprep.subr.mxu0 0.0
  %5369 = vmatpush1.msra.mxu0 0.0
  %5370 = vmatprep.subr.mxu0 0.0
  %5371 = vmatpush1.msra.mxu0 0.0
  %5372 = vmatprep.mubr.f32.mxu0 0.0
  %5373 = vmatmul.mubr.f32.gmra.mrb[0].mxu0 %v341
  %v5374 = vpop.f32.mrb[0].mxu0
  %v5375 = vadd.f32 0.0, %v5374
  %v5376 = vpop.f32.mrb[0].mxu0
  %5377 = vmatprep.mubr.f32.mxu0 0.0
  %5378 = vmatmul.mubr.f32.gmra.mrb[0].mxu0 %v344
  %v5379 = vpop.f32.mrb[0].mxu0
  %v5380 = vadd.f32 0.0, %v5379
  %v5381 = vpop.f32.mrb[0].mxu0
  %5382 = vdwg.mxu0
  %5383 = vmatprep.subr.mxu0 0.0
  %5384 = vmatpush1.msra.mxu0 %v88
  %5385 = vmatprep.subr.mxu0 0.0
  %5386 = vmatpush1.msra.mxu0 %v89
  %5387 = vmatprep.subr.mxu0 0.0
  %5388 = vmatpush1.msra.mxu0 %v90
  %5389 = vmatprep.subr.mxu0 0.0
  %5390 = vmatpush1.msra.mxu0 %v91
  %5391 = vmatprep.subr.mxu0 0.0
  %5392 = vmatpush1.msra.mxu0 0.0
  %5393 = vmatprep.subr.mxu0 0.0
  %5394 = vmatpush1.msra.mxu0 0.0
  %5395 = vmatprep.subr.mxu0 0.0
  %5396 = vmatpush1.msra.mxu0 0.0
  %5397 = vmatprep.subr.mxu0 0.0
  %5398 = vmatpush1.msra.mxu0 0.0
  %5399 = vmatprep.subr.mxu0 0.0
  %5400 = vmatpush1.msra.mxu0 0.0
  %5401 = vmatprep.subr.mxu0 0.0
  %5402 = vmatpush1.msra.mxu0 0.0
  %5403 = vmatprep.subr.mxu0 0.0
  %5404 = vmatpush1.msra.mxu0 0.0
  %5405 = vmatprep.subr.mxu0 0.0
  %5406 = vmatpush1.msra.mxu0 0.0
  %5407 = vmatprep.subr.mxu0 0.0
  %5408 = vmatpush1.msra.mxu0 0.0
  %5409 = vmatprep.subr.mxu0 0.0
  %5410 = vmatpush1.msra.mxu0 0.0
  %5411 = vmatprep.subr.mxu0 0.0
  %5412 = vmatpush1.msra.mxu0 0.0
  %5413 = vmatprep.subr.mxu0 0.0
  %5414 = vmatpush1.msra.mxu0 0.0
  %5415 = vmatprep.subr.mxu0 0.0
  %5416 = vmatpush1.msra.mxu0 0.0
  %5417 = vmatprep.subr.mxu0 0.0
  %5418 = vmatpush1.msra.mxu0 0.0
  %5419 = vmatprep.subr.mxu0 0.0
  %5420 = vmatpush1.msra.mxu0 0.0
  %5421 = vmatprep.subr.mxu0 0.0
  %5422 = vmatpush1.msra.mxu0 0.0
  %5423 = vmatprep.subr.mxu0 0.0
  %5424 = vmatpush1.msra.mxu0 0.0
  %5425 = vmatprep.subr.mxu0 0.0
  %5426 = vmatpush1.msra.mxu0 0.0
  %5427 = vmatprep.subr.mxu0 0.0
  %5428 = vmatpush1.msra.mxu0 0.0
  %5429 = vmatprep.subr.mxu0 0.0
  %5430 = vmatpush1.msra.mxu0 0.0
  %5431 = vmatprep.subr.mxu0 0.0
  %5432 = vmatpush1.msra.mxu0 0.0
  %5433 = vmatprep.subr.mxu0 0.0
  %5434 = vmatpush1.msra.mxu0 0.0
  %5435 = vmatprep.subr.mxu0 0.0
  %5436 = vmatpush1.msra.mxu0 0.0
  %5437 = vmatprep.subr.mxu0 0.0
  %5438 = vmatpush1.msra.mxu0 0.0
  %5439 = vmatprep.subr.mxu0 0.0
  %5440 = vmatpush1.msra.mxu0 0.0
  %5441 = vmatprep.subr.mxu0 0.0
  %5442 = vmatpush1.msra.mxu0 0.0
  %5443 = vmatprep.subr.mxu0 0.0
  %5444 = vmatpush1.msra.mxu0 0.0
  %5445 = vmatprep.subr.mxu0 0.0
  %5446 = vmatpush1.msra.mxu0 0.0
  %5447 = vmatprep.mubr.f32.mxu0 0.0
  %5448 = vmatmul.mubr.f32.gmra.mrb[0].mxu0 %v422
  %v5449 = vpop.f32.mrb[0].mxu0
  %v5450 = vadd.f32 0.0, %v5449
  %v5451 = vpop.f32.mrb[0].mxu0
  %5452 = vmatprep.mubr.f32.mxu0 0.0
  %5453 = vmatmul.mubr.f32.gmra.mrb[0].mxu0 %v425
  %v5454 = vpop.f32.mrb[0].mxu0
  %v5455 = vadd.f32 0.0, %v5454
  %v5456 = vpop.f32.mrb[0].mxu0
  %5457 = vdwg.mxu0
  %5458 = vmatprep.subr.mxu0 0.0
  %5459 = vmatpush1.msra.mxu0 %v88
  %5460 = vmatprep.subr.mxu0 0.0
  %5461 = vmatpush1.msra.mxu0 %v89
  %5462 = vmatprep.subr.mxu0 0.0
  %5463 = vmatpush1.msra.mxu0 %v90
  %5464 = vmatprep.subr.mxu0 0.0
  %5465 = vmatpush1.msra.mxu0 %v91
  %5466 = vmatprep.subr.mxu0 0.0
  %5467 = vmatpush1.msra.mxu0 0.0
  %5468 = vmatprep.subr.mxu0 0.0
  %5469 = vmatpush1.msra.mxu0 0.0
  %5470 = vmatprep.subr.mxu0 0.0
  %5471 = vmatpush1.msra.mxu0 0.0
  %5472 = vmatprep.subr.mxu0 0.0
  %5473 = vmatpush1.msra.mxu0 0.0
  %5474 = vmatprep.subr.mxu0 0.0
  %5475 = vmatpush1.msra.mxu0 0.0
  %5476 = vmatprep.subr.mxu0 0.0
  %5477 = vmatpush1.msra.mxu0 0.0
  %5478 = vmatprep.subr.mxu0 0.0
  %5479 = vmatpush1.msra.mxu0 0.0
  %5480 = vmatprep.subr.mxu0 0.0
  %5481 = vmatpush1.msra.mxu0 0.0
  %5482 = vmatprep.subr.mxu0 0.0
  %5483 = vmatpush1.msra.mxu0 0.0
  %5484 = vmatprep.subr.mxu0 0.0
  %5485 = vmatpush1.msra.mxu0 0.0
  %5486 = vmatprep.subr.mxu0 0.0
  %5487 = vmatpush1.msra.mxu0 0.0
  %5488 = vmatprep.subr.mxu0 0.0
  %5489 = vmatpush1.msra.mxu0 0.0
  %5490 = vmatprep.subr.mxu0 0.0
  %5491 = vmatpush1.msra.mxu0 0.0
  %5492 = vmatprep.subr.mxu0 0.0
  %5493 = vmatpush1.msra.mxu0 0.0
  %5494 = vmatprep.subr.mxu0 0.0
  %5495 = vmatpush1.msra.mxu0 0.0
  %5496 = vmatprep.subr.mxu0 0.0
  %5497 = vmatpush1.msra.mxu0 0.0
  %5498 = vmatprep.subr.mxu0 0.0
  %5499 = vmatpush1.msra.mxu0 0.0
  %5500 = vmatprep.subr.mxu0 0.0
  %5501 = vmatpush1.msra.mxu0 0.0
  %5502 = vmatprep.subr.mxu0 0.0
  %5503 = vmatpush1.msra.mxu0 0.0
  %5504 = vmatprep.subr.mxu0 0.0
  %5505 = vmatpush1.msra.mxu0 0.0
  %5506 = vmatprep.subr.mxu0 0.0
  %5507 = vmatpush1.msra.mxu0 0.0
  %5508 = vmatprep.subr.mxu0 0.0
  %5509 = vmatpush1.msra.mxu0 0.0
  %5510 = vmatprep.subr.mxu0 0.0
  %5511 = vmatpush1.msra.mxu0 0.0
  %5512 = vmatprep.subr.mxu0 0.0
  %5513 = vmatpush1.msra.mxu0 0.0
  %5514 = vmatprep.subr.mxu0 0.0
  %5515 = vmatpush1.msra.mxu0 0.0
  %5516 = vmatprep.subr.mxu0 0.0
  %5517 = vmatpush1.msra.mxu0 0.0
  %5518 = vmatprep.subr.mxu0 0.0
  %5519 = vmatpush1.msra.mxu0 0.0
  %5520 = vmatprep.subr.mxu0 0.0
  %5521 = vmatpush1.msra.mxu0 0.0
  %5522 = vmatprep.mubr.f32.mxu0 0.0
  %5523 = vmatmul.mubr.f32.gmra.mrb[0].mxu0 %v503
  %v5524 = vpop.f32.mrb[0].mxu0
  %v5525 = vadd.f32 0.0, %v5524
  %v5526 = vpop.f32.mrb[0].mxu0
  %5527 = vmatprep.mubr.f32.mxu0 0.0
  %5528 = vmatmul.mubr.f32.gmra.mrb[0].mxu0 %v506
  %v5529 = vpop.f32.mrb[0].mxu0
  %v5530 = vadd.f32 0.0, %v5529
  %v5531 = vpop.f32.mrb[0].mxu0
  %5532 = vdwg.mxu0
  %vm5533 = vcmask 64512
  %v5535 = vsel %vm5533, %v170, 0
  %v5538 = vsel %vm5533, %v175, 0
  %v5541 = vsel %vm5533, %v2000, 0
  %v5544 = vsel %vm5533, %v2005, 0
  %5546 = vmatprep.subr.mxu0 0.0
  %5547 = vmatpush1.xpose.msra.mxu0 %v5541
  %5548 = vmatprep.subr.mxu0 0.0
  %5549 = vmatpush1.xpose.msra.mxu0 %v5544
  %5550 = vmatprep.subr.mxu0 0.0
  %5551 = vmatpush1.xpose.msra.mxu0 0.0
  %5552 = vmatprep.subr.mxu0 0.0
  %5553 = vmatpush1.xpose.msra.mxu0 0.0
  %5554 = vmatprep.subr.mxu0 0.0
  %5555 = vmatpush1.xpose.msra.mxu0 0.0
  %5556 = vmatprep.subr.mxu0 0.0
  %5557 = vmatpush1.xpose.msra.mxu0 0.0
  %5558 = vmatprep.subr.mxu0 0.0
  %5559 = vmatpush1.xpose.msra.mxu0 0.0
  %5560 = vmatprep.subr.mxu0 0.0
  %5561 = vmatpush1.xpose.msra.mxu0 0.0
  %5562 = vmatprep.subr.mxu0 0.0
  %5563 = vmatpush1.xpose.msra.mxu0 0.0
  %5564 = vmatprep.subr.mxu0 0.0
  %5565 = vmatpush1.xpose.msra.mxu0 0.0
  %5566 = vmatprep.subr.mxu0 0.0
  %5567 = vmatpush1.xpose.msra.mxu0 0.0
  %5568 = vmatprep.subr.mxu0 0.0
  %5569 = vmatpush1.xpose.msra.mxu0 0.0
  %5570 = vmatprep.subr.mxu0 0.0
  %5571 = vmatpush1.xpose.msra.mxu0 0.0
  %5572 = vmatprep.subr.mxu0 0.0
  %5573 = vmatpush1.xpose.msra.mxu0 0.0
  %5574 = vmatprep.subr.mxu0 0.0
  %5575 = vmatpush1.xpose.msra.mxu0 0.0
  %5576 = vmatprep.subr.mxu0 0.0
  %5577 = vmatpush1.xpose.msra.mxu0 0.0
  %5578 = vmatprep.subr.mxu0 0.0
  %5579 = vmatpush1.xpose.msra.mxu0 0.0
  %5580 = vmatprep.subr.mxu0 0.0
  %5581 = vmatpush1.xpose.msra.mxu0 0.0
  %5582 = vmatprep.subr.mxu0 0.0
  %5583 = vmatpush1.xpose.msra.mxu0 0.0
  %5584 = vmatprep.subr.mxu0 0.0
  %5585 = vmatpush1.xpose.msra.mxu0 0.0
  %5586 = vmatprep.subr.mxu0 0.0
  %5587 = vmatpush1.xpose.msra.mxu0 0.0
  %5588 = vmatprep.subr.mxu0 0.0
  %5589 = vmatpush1.xpose.msra.mxu0 0.0
  %5590 = vmatprep.subr.mxu0 0.0
  %5591 = vmatpush1.xpose.msra.mxu0 0.0
  %5592 = vmatprep.subr.mxu0 0.0
  %5593 = vmatpush1.xpose.msra.mxu0 0.0
  %5594 = vmatprep.subr.mxu0 0.0
  %5595 = vmatpush1.xpose.msra.mxu0 0.0
  %5596 = vmatprep.subr.mxu0 0.0
  %5597 = vmatpush1.xpose.msra.mxu0 0.0
  %5598 = vmatprep.subr.mxu0 0.0
  %5599 = vmatpush1.xpose.msra.mxu0 0.0
  %5600 = vmatprep.subr.mxu0 0.0
  %5601 = vmatpush1.xpose.msra.mxu0 0.0
  %5602 = vmatprep.subr.mxu0 0.0
  %5603 = vmatpush1.xpose.msra.mxu0 0.0
  %5604 = vmatprep.subr.mxu0 0.0
  %5605 = vmatpush1.xpose.msra.mxu0 0.0
  %5606 = vmatprep.subr.mxu0 0.0
  %5607 = vmatpush1.xpose.msra.mxu0 0.0
  %5608 = vmatprep.subr.mxu0 0.0
  %5609 = vmatpush1.xpose.msra.mxu0 0.0
  %5610 = vmatprep.mubr.f32.mxu0 0.0
  %5611 = vmatmul.mubr.f32.gmra.mrb[0].mxu0 %v5535
  %v5612 = vpop.f32.mrb[0].mxu0
  %v5613 = vadd.f32 0.0, %v5612
  %v5614 = vpop.f32.mrb[0].mxu0
  %5615 = vmatprep.mubr.f32.mxu0 0.0
  %5616 = vmatmul.mubr.f32.gmra.mrb[0].mxu0 %v5538
  %v5617 = vpop.f32.mrb[0].mxu0
  %v5618 = vadd.f32 0.0, %v5617
  %v5619 = vpop.f32.mrb[0].mxu0
  %5620 = vdwg.mxu0
  %v5622 = vsel %vm5533, %v251, 0
  %v5625 = vsel %vm5533, %v256, 0
  %v5628 = vsel %vm5533, %v2075, 0
  %v5631 = vsel %vm5533, %v2080, 0
  %5633 = vmatprep.subr.mxu0 0.0
  %5634 = vmatpush1.xpose.msra.mxu0 %v5628
  %5635 = vmatprep.subr.mxu0 0.0
  %5636 = vmatpush1.xpose.msra.mxu0 %v5631
  %5637 = vmatprep.subr.mxu0 0.0
  %5638 = vmatpush1.xpose.msra.mxu0 0.0
  %5639 = vmatprep.subr.mxu0 0.0
  %5640 = vmatpush1.xpose.msra.mxu0 0.0
  %5641 = vmatprep.subr.mxu0 0.0
  %5642 = vmatpush1.xpose.msra.mxu0 0.0
  %5643 = vmatprep.subr.mxu0 0.0
  %5644 = vmatpush1.xpose.msra.mxu0 0.0
  %5645 = vmatprep.subr.mxu0 0.0
  %5646 = vmatpush1.xpose.msra.mxu0 0.0
  %5647 = vmatprep.subr.mxu0 0.0
  %5648 = vmatpush1.xpose.msra.mxu0 0.0
  %5649 = vmatprep.subr.mxu0 0.0
  %5650 = vmatpush1.xpose.msra.mxu0 0.0
  %5651 = vmatprep.subr.mxu0 0.0
  %5652 = vmatpush1.xpose.msra.mxu0 0.0
  %5653 = vmatprep.subr.mxu0 0.0
  %5654 = vmatpush1.xpose.msra.mxu0 0.0
  %5655 = vmatprep.subr.mxu0 0.0
  %5656 = vmatpush1.xpose.msra.mxu0 0.0
  %5657 = vmatprep.subr.mxu0 0.0
  %5658 = vmatpush1.xpose.msra.mxu0 0.0
  %5659 = vmatprep.subr.mxu0 0.0
  %5660 = vmatpush1.xpose.msra.mxu0 0.0
  %5661 = vmatprep.subr.mxu0 0.0
  %5662 = vmatpush1.xpose.msra.mxu0 0.0
  %5663 = vmatprep.subr.mxu0 0.0
  %5664 = vmatpush1.xpose.msra.mxu0 0.0
  %5665 = vmatprep.subr.mxu0 0.0
  %5666 = vmatpush1.xpose.msra.mxu0 0.0
  %5667 = vmatprep.subr.mxu0 0.0
  %5668 = vmatpush1.xpose.msra.mxu0 0.0
  %5669 = vmatprep.subr.mxu0 0.0
  %5670 = vmatpush1.xpose.msra.mxu0 0.0
  %5671 = vmatprep.subr.mxu0 0.0
  %5672 = vmatpush1.xpose.msra.mxu0 0.0
  %5673 = vmatprep.subr.mxu0 0.0
  %5674 = vmatpush1.xpose.msra.mxu0 0.0
  %5675 = vmatprep.subr.mxu0 0.0
  %5676 = vmatpush1.xpose.msra.mxu0 0.0
  %5677 = vmatprep.subr.mxu0 0.0
  %5678 = vmatpush1.xpose.msra.mxu0 0.0
  %5679 = vmatprep.subr.mxu0 0.0
  %5680 = vmatpush1.xpose.msra.mxu0 0.0
  %5681 = vmatprep.subr.mxu0 0.0
  %5682 = vmatpush1.xpose.msra.mxu0 0.0
  %5683 = vmatprep.subr.mxu0 0.0
  %5684 = vmatpush1.xpose.msra.mxu0 0.0
  %5685 = vmatprep.subr.mxu0 0.0
  %5686 = vmatpush1.xpose.msra.mxu0 0.0
  %5687 = vmatprep.subr.mxu0 0.0
  %5688 = vmatpush1.xpose.msra.mxu0 0.0
  %5689 = vmatprep.subr.mxu0 0.0
  %5690 = vmatpush1.xpose.msra.mxu0 0.0
  %5691 = vmatprep.subr.mxu0 0.0
  %5692 = vmatpush1.xpose.msra.mxu0 0.0
  %5693 = vmatprep.subr.mxu0 0.0
  %5694 = vmatpush1.xpose.msra.mxu0 0.0
  %5695 = vmatprep.subr.mxu0 0.0
  %5696 = vmatpush1.xpose.msra.mxu0 0.0
  %5697 = vmatprep.mubr.f32.mxu0 0.0
  %5698 = vmatmul.mubr.f32.gmra.mrb[0].mxu0 %v5622
  %v5699 = vpop.f32.mrb[0].mxu0
  %v5700 = vadd.f32 0.0, %v5699
  %v5701 = vpop.f32.mrb[0].mxu0
  %5702 = vmatprep.mubr.f32.mxu0 0.0
  %5703 = vmatmul.mubr.f32.gmra.mrb[0].mxu0 %v5625
  %v5704 = vpop.f32.mrb[0].mxu0
  %v5705 = vadd.f32 0.0, %v5704
  %v5706 = vpop.f32.mrb[0].mxu0
  %5707 = vdwg.mxu0
  %v5709 = vsel %vm5533, %v332, 0
  %v5712 = vsel %vm5533, %v337, 0
  %v5715 = vsel %vm5533, %v2150, 0
  %v5718 = vsel %vm5533, %v2155, 0
  %5720 = vmatprep.subr.mxu0 0.0
  %5721 = vmatpush1.xpose.msra.mxu0 %v5715
  %5722 = vmatprep.subr.mxu0 0.0
  %5723 = vmatpush1.xpose.msra.mxu0 %v5718
  %5724 = vmatprep.subr.mxu0 0.0
  %5725 = vmatpush1.xpose.msra.mxu0 0.0
  %5726 = vmatprep.subr.mxu0 0.0
  %5727 = vmatpush1.xpose.msra.mxu0 0.0
  %5728 = vmatprep.subr.mxu0 0.0
  %5729 = vmatpush1.xpose.msra.mxu0 0.0
  %5730 = vmatprep.subr.mxu0 0.0
  %5731 = vmatpush1.xpose.msra.mxu0 0.0
  %5732 = vmatprep.subr.mxu0 0.0
  %5733 = vmatpush1.xpose.msra.mxu0 0.0
  %5734 = vmatprep.subr.mxu0 0.0
  %5735 = vmatpush1.xpose.msra.mxu0 0.0
  %5736 = vmatprep.subr.mxu0 0.0
  %5737 = vmatpush1.xpose.msra.mxu0 0.0
  %5738 = vmatprep.subr.mxu0 0.0
  %5739 = vmatpush1.xpose.msra.mxu0 0.0
  %5740 = vmatprep.subr.mxu0 0.0
  %5741 = vmatpush1.xpose.msra.mxu0 0.0
  %5742 = vmatprep.subr.mxu0 0.0
  %5743 = vmatpush1.xpose.msra.mxu0 0.0
  %5744 = vmatprep.subr.mxu0 0.0
  %5745 = vmatpush1.xpose.msra.mxu0 0.0
  %5746 = vmatprep.subr.mxu0 0.0
  %5747 = vmatpush1.xpose.msra.mxu0 0.0
  %5748 = vmatprep.subr.mxu0 0.0
  %5749 = vmatpush1.xpose.msra.mxu0 0.0
  %5750 = vmatprep.subr.mxu0 0.0
  %5751 = vmatpush1.xpose.msra.mxu0 0.0
  %5752 = vmatprep.subr.mxu0 0.0
  %5753 = vmatpush1.xpose.msra.mxu0 0.0
  %5754 = vmatprep.subr.mxu0 0.0
  %5755 = vmatpush1.xpose.msra.mxu0 0.0
  %5756 = vmatprep.subr.mxu0 0.0
  %5757 = vmatpush1.xpose.msra.mxu0 0.0
  %5758 = vmatprep.subr.mxu0 0.0
  %5759 = vmatpush1.xpose.msra.mxu0 0.0
  %5760 = vmatprep.subr.mxu0 0.0
  %5761 = vmatpush1.xpose.msra.mxu0 0.0
  %5762 = vmatprep.subr.mxu0 0.0
  %5763 = vmatpush1.xpose.msra.mxu0 0.0
  %5764 = vmatprep.subr.mxu0 0.0
  %5765 = vmatpush1.xpose.msra.mxu0 0.0
  %5766 = vmatprep.subr.mxu0 0.0
  %5767 = vmatpush1.xpose.msra.mxu0 0.0
  %5768 = vmatprep.subr.mxu0 0.0
  %5769 = vmatpush1.xpose.msra.mxu0 0.0
  %5770 = vmatprep.subr.mxu0 0.0
  %5771 = vmatpush1.xpose.msra.mxu0 0.0
  %5772 = vmatprep.subr.mxu0 0.0
  %5773 = vmatpush1.xpose.msra.mxu0 0.0
  %5774 = vmatprep.subr.mxu0 0.0
  %5775 = vmatpush1.xpose.msra.mxu0 0.0
  %5776 = vmatprep.subr.mxu0 0.0
  %5777 = vmatpush1.xpose.msra.mxu0 0.0
  %5778 = vmatprep.subr.mxu0 0.0
  %5779 = vmatpush1.xpose.msra.mxu0 0.0
  %5780 = vmatprep.subr.mxu0 0.0
  %5781 = vmatpush1.xpose.msra.mxu0 0.0
  %5782 = vmatprep.subr.mxu0 0.0
  %5783 = vmatpush1.xpose.msra.mxu0 0.0
  %5784 = vmatprep.mubr.f32.mxu0 0.0
  %5785 = vmatmul.mubr.f32.gmra.mrb[0].mxu0 %v5709
  %v5786 = vpop.f32.mrb[0].mxu0
  %v5787 = vadd.f32 0.0, %v5786
  %v5788 = vpop.f32.mrb[0].mxu0
  %5789 = vmatprep.mubr.f32.mxu0 0.0
  %5790 = vmatmul.mubr.f32.gmra.mrb[0].mxu0 %v5712
  %v5791 = vpop.f32.mrb[0].mxu0
  %v5792 = vadd.f32 0.0, %v5791
  %v5793 = vpop.f32.mrb[0].mxu0
  %5794 = vdwg.mxu0
  %v5796 = vsel %vm5533, %v413, 0
  %v5799 = vsel %vm5533, %v418, 0
  %v5802 = vsel %vm5533, %v2225, 0
  %v5805 = vsel %vm5533, %v2230, 0
  %5807 = vmatprep.subr.mxu0 0.0
  %5808 = vmatpush1.xpose.msra.mxu0 %v5802
  %5809 = vmatprep.subr.mxu0 0.0
  %5810 = vmatpush1.xpose.msra.mxu0 %v5805
  %5811 = vmatprep.subr.mxu0 0.0
  %5812 = vmatpush1.xpose.msra.mxu0 0.0
  %5813 = vmatprep.subr.mxu0 0.0
  %5814 = vmatpush1.xpose.msra.mxu0 0.0
  %5815 = vmatprep.subr.mxu0 0.0
  %5816 = vmatpush1.xpose.msra.mxu0 0.0
  %5817 = vmatprep.subr.mxu0 0.0
  %5818 = vmatpush1.xpose.msra.mxu0 0.0
  %5819 = vmatprep.subr.mxu0 0.0
  %5820 = vmatpush1.xpose.msra.mxu0 0.0
  %5821 = vmatprep.subr.mxu0 0.0
  %5822 = vmatpush1.xpose.msra.mxu0 0.0
  %5823 = vmatprep.subr.mxu0 0.0
  %5824 = vmatpush1.xpose.msra.mxu0 0.0
  %5825 = vmatprep.subr.mxu0 0.0
  %5826 = vmatpush1.xpose.msra.mxu0 0.0
  %5827 = vmatprep.subr.mxu0 0.0
  %5828 = vmatpush1.xpose.msra.mxu0 0.0
  %5829 = vmatprep.subr.mxu0 0.0
  %5830 = vmatpush1.xpose.msra.mxu0 0.0
  %5831 = vmatprep.subr.mxu0 0.0
  %5832 = vmatpush1.xpose.msra.mxu0 0.0
  %5833 = vmatprep.subr.mxu0 0.0
  %5834 = vmatpush1.xpose.msra.mxu0 0.0
  %5835 = vmatprep.subr.mxu0 0.0
  %5836 = vmatpush1.xpose.msra.mxu0 0.0
  %5837 = vmatprep.subr.mxu0 0.0
  %5838 = vmatpush1.xpose.msra.mxu0 0.0
  %5839 = vmatprep.subr.mxu0 0.0
  %5840 = vmatpush1.xpose.msra.mxu0 0.0
  %5841 = vmatprep.subr.mxu0 0.0
  %5842 = vmatpush1.xpose.msra.mxu0 0.0
  %5843 = vmatprep.subr.mxu0 0.0
  %5844 = vmatpush1.xpose.msra.mxu0 0.0
  %5845 = vmatprep.subr.mxu0 0.0
  %5846 = vmatpush1.xpose.msra.mxu0 0.0
  %5847 = vmatprep.subr.mxu0 0.0
  %5848 = vmatpush1.xpose.msra.mxu0 0.0
  %5849 = vmatprep.subr.mxu0 0.0
  %5850 = vmatpush1.xpose.msra.mxu0 0.0
  %5851 = vmatprep.subr.mxu0 0.0
  %5852 = vmatpush1.xpose.msra.mxu0 0.0
  %5853 = vmatprep.subr.mxu0 0.0
  %5854 = vmatpush1.xpose.msra.mxu0 0.0
  %5855 = vmatprep.subr.mxu0 0.0
  %5856 = vmatpush1.xpose.msra.mxu0 0.0
  %5857 = vmatprep.subr.mxu0 0.0
  %5858 = vmatpush1.xpose.msra.mxu0 0.0
  %5859 = vmatprep.subr.mxu0 0.0
  %5860 = vmatpush1.xpose.msra.mxu0 0.0
  %5861 = vmatprep.subr.mxu0 0.0
  %5862 = vmatpush1.xpose.msra.mxu0 0.0
  %5863 = vmatprep.subr.mxu0 0.0
  %5864 = vmatpush1.xpose.msra.mxu0 0.0
  %5865 = vmatprep.subr.mxu0 0.0
  %5866 = vmatpush1.xpose.msra.mxu0 0.0
  %5867 = vmatprep.subr.mxu0 0.0
  %5868 = vmatpush1.xpose.msra.mxu0 0.0
  %5869 = vmatprep.subr.mxu0 0.0
  %5870 = vmatpush1.xpose.msra.mxu0 0.0
  %5871 = vmatprep.mubr.f32.mxu0 0.0
  %5872 = vmatmul.mubr.f32.gmra.mrb[0].mxu0 %v5796
  %v5873 = vpop.f32.mrb[0].mxu0
  %v5874 = vadd.f32 0.0, %v5873
  %v5875 = vpop.f32.mrb[0].mxu0
  %5876 = vmatprep.mubr.f32.mxu0 0.0
  %5877 = vmatmul.mubr.f32.gmra.mrb[0].mxu0 %v5799
  %v5878 = vpop.f32.mrb[0].mxu0
  %v5879 = vadd.f32 0.0, %v5878
  %v5880 = vpop.f32.mrb[0].mxu0
  %5881 = vdwg.mxu0
  %v5883 = vsel %vm5533, %v494, 0
  %v5886 = vsel %vm5533, %v499, 0
  %v5889 = vsel %vm5533, %v2300, 0
  %v5892 = vsel %vm5533, %v2305, 0
  %5894 = vmatprep.subr.mxu0 0.0
  %5895 = vmatpush1.xpose.msra.mxu0 %v5889
  %5896 = vmatprep.subr.mxu0 0.0
  %5897 = vmatpush1.xpose.msra.mxu0 %v5892
  %5898 = vmatprep.subr.mxu0 0.0
  %5899 = vmatpush1.xpose.msra.mxu0 0.0
  %5900 = vmatprep.subr.mxu0 0.0
  %5901 = vmatpush1.xpose.msra.mxu0 0.0
  %5902 = vmatprep.subr.mxu0 0.0
  %5903 = vmatpush1.xpose.msra.mxu0 0.0
  %5904 = vmatprep.subr.mxu0 0.0
  %5905 = vmatpush1.xpose.msra.mxu0 0.0
  %5906 = vmatprep.subr.mxu0 0.0
  %5907 = vmatpush1.xpose.msra.mxu0 0.0
  %5908 = vmatprep.subr.mxu0 0.0
  %5909 = vmatpush1.xpose.msra.mxu0 0.0
  %5910 = vmatprep.subr.mxu0 0.0
  %5911 = vmatpush1.xpose.msra.mxu0 0.0
  %5912 = vmatprep.subr.mxu0 0.0
  %5913 = vmatpush1.xpose.msra.mxu0 0.0
  %5914 = vmatprep.subr.mxu0 0.0
  %5915 = vmatpush1.xpose.msra.mxu0 0.0
  %5916 = vmatprep.subr.mxu0 0.0
  %5917 = vmatpush1.xpose.msra.mxu0 0.0
  %5918 = vmatprep.subr.mxu0 0.0
  %5919 = vmatpush1.xpose.msra.mxu0 0.0
  %5920 = vmatprep.subr.mxu0 0.0
  %5921 = vmatpush1.xpose.msra.mxu0 0.0
  %5922 = vmatprep.subr.mxu0 0.0
  %5923 = vmatpush1.xpose.msra.mxu0 0.0
  %5924 = vmatprep.subr.mxu0 0.0
  %5925 = vmatpush1.xpose.msra.mxu0 0.0
  %5926 = vmatprep.subr.mxu0 0.0
  %5927 = vmatpush1.xpose.msra.mxu0 0.0
  %5928 = vmatprep.subr.mxu0 0.0
  %5929 = vmatpush1.xpose.msra.mxu0 0.0
  %5930 = vmatprep.subr.mxu0 0.0
  %5931 = vmatpush1.xpose.msra.mxu0 0.0
  %5932 = vmatprep.subr.mxu0 0.0
  %5933 = vmatpush1.xpose.msra.mxu0 0.0
  %5934 = vmatprep.subr.mxu0 0.0
  %5935 = vmatpush1.xpose.msra.mxu0 0.0
  %5936 = vmatprep.subr.mxu0 0.0
  %5937 = vmatpush1.xpose.msra.mxu0 0.0
  %5938 = vmatprep.subr.mxu0 0.0
  %5939 = vmatpush1.xpose.msra.mxu0 0.0
  %5940 = vmatprep.subr.mxu0 0.0
  %5941 = vmatpush1.xpose.msra.mxu0 0.0
  %5942 = vmatprep.subr.mxu0 0.0
  %5943 = vmatpush1.xpose.msra.mxu0 0.0
  %5944 = vmatprep.subr.mxu0 0.0
  %5945 = vmatpush1.xpose.msra.mxu0 0.0
  %5946 = vmatprep.subr.mxu0 0.0
  %5947 = vmatpush1.xpose.msra.mxu0 0.0
  %5948 = vmatprep.subr.mxu0 0.0
  %5949 = vmatpush1.xpose.msra.mxu0 0.0
  %5950 = vmatprep.subr.mxu0 0.0
  %5951 = vmatpush1.xpose.msra.mxu0 0.0
  %5952 = vmatprep.subr.mxu0 0.0
  %5953 = vmatpush1.xpose.msra.mxu0 0.0
  %5954 = vmatprep.subr.mxu0 0.0
  %5955 = vmatpush1.xpose.msra.mxu0 0.0
  %5956 = vmatprep.subr.mxu0 0.0
  %5957 = vmatpush1.xpose.msra.mxu0 0.0
  %5958 = vmatprep.mubr.f32.mxu0 0.0
  %5959 = vmatmul.mubr.f32.gmra.mrb[0].mxu0 %v5883
  %v5960 = vpop.f32.mrb[0].mxu0
  %v5961 = vadd.f32 0.0, %v5960
  %v5962 = vpop.f32.mrb[0].mxu0
  %5963 = vmatprep.mubr.f32.mxu0 0.0
  %5964 = vmatmul.mubr.f32.gmra.mrb[0].mxu0 %v5886
  %v5965 = vpop.f32.mrb[0].mxu0
  %v5966 = vadd.f32 0.0, %v5965
  %v5967 = vpop.f32.mrb[0].mxu0
  %5968 = vdwg.mxu0
  %v5970 = vsel %vm5533, %v575, 0
  %v5973 = vsel %vm5533, %v580, 0
  %v5976 = vsel %vm5533, %v2375, 0
  %v5979 = vsel %vm5533, %v2380, 0
  %5981 = vmatprep.subr.mxu0 0.0
  %5982 = vmatpush1.xpose.msra.mxu0 %v5976
  %5983 = vmatprep.subr.mxu0 0.0
  %5984 = vmatpush1.xpose.msra.mxu0 %v5979
  %5985 = vmatprep.subr.mxu0 0.0
  %5986 = vmatpush1.xpose.msra.mxu0 0.0
  %5987 = vmatprep.subr.mxu0 0.0
  %5988 = vmatpush1.xpose.msra.mxu0 0.0
  %5989 = vmatprep.subr.mxu0 0.0
  %5990 = vmatpush1.xpose.msra.mxu0 0.0
  %5991 = vmatprep.subr.mxu0 0.0
  %5992 = vmatpush1.xpose.msra.mxu0 0.0
  %5993 = vmatprep.subr.mxu0 0.0
  %5994 = vmatpush1.xpose.msra.mxu0 0.0
  %5995 = vmatprep.subr.mxu0 0.0
  %5996 = vmatpush1.xpose.msra.mxu0 0.0
  %5997 = vmatprep.subr.mxu0 0.0
  %5998 = vmatpush1.xpose.msra.mxu0 0.0
  %5999 = vmatprep.subr.mxu0 0.0
  %6000 = vmatpush1.xpose.msra.mxu0 0.0
  %6001 = vmatprep.subr.mxu0 0.0
  %6002 = vmatpush1.xpose.msra.mxu0 0.0
  %6003 = vmatprep.subr.mxu0 0.0
  %6004 = vmatpush1.xpose.msra.mxu0 0.0
  %6005 = vmatprep.subr.mxu0 0.0
  %6006 = vmatpush1.xpose.msra.mxu0 0.0
  %6007 = vmatprep.subr.mxu0 0.0
  %6008 = vmatpush1.xpose.msra.mxu0 0.0
  %6009 = vmatprep.subr.mxu0 0.0
  %6010 = vmatpush1.xpose.msra.mxu0 0.0
  %6011 = vmatprep.subr.mxu0 0.0
  %6012 = vmatpush1.xpose.msra.mxu0 0.0
  %6013 = vmatprep.subr.mxu0 0.0
  %6014 = vmatpush1.xpose.msra.mxu0 0.0
  %6015 = vmatprep.subr.mxu0 0.0
  %6016 = vmatpush1.xpose.msra.mxu0 0.0
  %6017 = vmatprep.subr.mxu0 0.0
  %6018 = vmatpush1.xpose.msra.mxu0 0.0
  %6019 = vmatprep.subr.mxu0 0.0
  %6020 = vmatpush1.xpose.msra.mxu0 0.0
  %6021 = vmatprep.subr.mxu0 0.0
  %6022 = vmatpush1.xpose.msra.mxu0 0.0
  %6023 = vmatprep.subr.mxu0 0.0
  %6024 = vmatpush1.xpose.msra.mxu0 0.0
  %6025 = vmatprep.subr.mxu0 0.0
  %6026 = vmatpush1.xpose.msra.mxu0 0.0
  %6027 = vmatprep.subr.mxu0 0.0
  %6028 = vmatpush1.xpose.msra.mxu0 0.0
  %6029 = vmatprep.subr.mxu0 0.0
  %6030 = vmatpush1.xpose.msra.mxu0 0.0
  %6031 = vmatprep.subr.mxu0 0.0
  %6032 = vmatpush1.xpose.msra.mxu0 0.0
  %6033 = vmatprep.subr.mxu0 0.0
  %6034 = vmatpush1.xpose.msra.mxu0 0.0
  %6035 = vmatprep.subr.mxu0 0.0
  %6036 = vmatpush1.xpose.msra.mxu0 0.0
  %6037 = vmatprep.subr.mxu0 0.0
  %6038 = vmatpush1.xpose.msra.mxu0 0.0
  %6039 = vmatprep.subr.mxu0 0.0
  %6040 = vmatpush1.xpose.msra.mxu0 0.0
  %6041 = vmatprep.subr.mxu0 0.0
  %6042 = vmatpush1.xpose.msra.mxu0 0.0
  %6043 = vmatprep.subr.mxu0 0.0
  %6044 = vmatpush1.xpose.msra.mxu0 0.0
  %6045 = vmatprep.mubr.f32.mxu0 0.0
  %6046 = vmatmul.mubr.f32.gmra.mrb[0].mxu0 %v5970
  %v6047 = vpop.f32.mrb[0].mxu0
  %v6048 = vadd.f32 0.0, %v6047
  %v6049 = vpop.f32.mrb[0].mxu0
  %6050 = vmatprep.mubr.f32.mxu0 0.0
  %6051 = vmatmul.mubr.f32.gmra.mrb[0].mxu0 %v5973
  %v6052 = vpop.f32.mrb[0].mxu0
  %v6053 = vadd.f32 0.0, %v6052
  %v6054 = vpop.f32.mrb[0].mxu0
  %6055 = vdwg.mxu0
  %v6057 = vsel %vm5533, %v650, 0
  %v6060 = vsel %vm5533, %v655, 0
  %v6063 = vsel %vm5533, %v2450, 0
  %v6066 = vsel %vm5533, %v2455, 0
  %6068 = vmatprep.subr.mxu0 0.0
  %6069 = vmatpush1.xpose.msra.mxu0 %v6063
  %6070 = vmatprep.subr.mxu0 0.0
  %6071 = vmatpush1.xpose.msra.mxu0 %v6066
  %6072 = vmatprep.subr.mxu0 0.0
  %6073 = vmatpush1.xpose.msra.mxu0 0.0
  %6074 = vmatprep.subr.mxu0 0.0
  %6075 = vmatpush1.xpose.msra.mxu0 0.0
  %6076 = vmatprep.subr.mxu0 0.0
  %6077 = vmatpush1.xpose.msra.mxu0 0.0
  %6078 = vmatprep.subr.mxu0 0.0
  %6079 = vmatpush1.xpose.msra.mxu0 0.0
  %6080 = vmatprep.subr.mxu0 0.0
  %6081 = vmatpush1.xpose.msra.mxu0 0.0
  %6082 = vmatprep.subr.mxu0 0.0
  %6083 = vmatpush1.xpose.msra.mxu0 0.0
  %6084 = vmatprep.subr.mxu0 0.0
  %6085 = vmatpush1.xpose.msra.mxu0 0.0
  %6086 = vmatprep.subr.mxu0 0.0
  %6087 = vmatpush1.xpose.msra.mxu0 0.0
  %6088 = vmatprep.subr.mxu0 0.0
  %6089 = vmatpush1.xpose.msra.mxu0 0.0
  %6090 = vmatprep.subr.mxu0 0.0
  %6091 = vmatpush1.xpose.msra.mxu0 0.0
  %6092 = vmatprep.subr.mxu0 0.0
  %6093 = vmatpush1.xpose.msra.mxu0 0.0
  %6094 = vmatprep.subr.mxu0 0.0
  %6095 = vmatpush1.xpose.msra.mxu0 0.0
  %6096 = vmatprep.subr.mxu0 0.0
  %6097 = vmatpush1.xpose.msra.mxu0 0.0
  %6098 = vmatprep.subr.mxu0 0.0
  %6099 = vmatpush1.xpose.msra.mxu0 0.0
  %6100 = vmatprep.subr.mxu0 0.0
  %6101 = vmatpush1.xpose.msra.mxu0 0.0
  %6102 = vmatprep.subr.mxu0 0.0
  %6103 = vmatpush1.xpose.msra.mxu0 0.0
  %6104 = vmatprep.subr.mxu0 0.0
  %6105 = vmatpush1.xpose.msra.mxu0 0.0
  %6106 = vmatprep.subr.mxu0 0.0
  %6107 = vmatpush1.xpose.msra.mxu0 0.0
  %6108 = vmatprep.subr.mxu0 0.0
  %6109 = vmatpush1.xpose.msra.mxu0 0.0
  %6110 = vmatprep.subr.mxu0 0.0
  %6111 = vmatpush1.xpose.msra.mxu0 0.0
  %6112 = vmatprep.subr.mxu0 0.0
  %6113 = vmatpush1.xpose.msra.mxu0 0.0
  %6114 = vmatprep.subr.mxu0 0.0
  %6115 = vmatpush1.xpose.msra.mxu0 0.0
  %6116 = vmatprep.subr.mxu0 0.0
  %6117 = vmatpush1.xpose.msra.mxu0 0.0
  %6118 = vmatprep.subr.mxu0 0.0
  %6119 = vmatpush1.xpose.msra.mxu0 0.0
  %6120 = vmatprep.subr.mxu0 0.0
  %6121 = vmatpush1.xpose.msra.mxu0 0.0
  %6122 = vmatprep.subr.mxu0 0.0
  %6123 = vmatpush1.xpose.msra.mxu0 0.0
  %6124 = vmatprep.subr.mxu0 0.0
  %6125 = vmatpush1.xpose.msra.mxu0 0.0
  %6126 = vmatprep.subr.mxu0 0.0
  %6127 = vmatpush1.xpose.msra.mxu0 0.0
  %6128 = vmatprep.subr.mxu0 0.0
  %6129 = vmatpush1.xpose.msra.mxu0 0.0
  %6130 = vmatprep.subr.mxu0 0.0
  %6131 = vmatpush1.xpose.msra.mxu0 0.0
  %6132 = vmatprep.mubr.f32.mxu0 0.0
  %6133 = vmatmul.mubr.f32.gmra.mrb[0].mxu0 %v6057
  %v6134 = vpop.f32.mrb[0].mxu0
  %v6135 = vadd.f32 0.0, %v6134
  %v6136 = vpop.f32.mrb[0].mxu0
  %6137 = vmatprep.mubr.f32.mxu0 0.0
  %6138 = vmatmul.mubr.f32.gmra.mrb[0].mxu0 %v6060
  %v6139 = vpop.f32.mrb[0].mxu0
  %v6140 = vadd.f32 0.0, %v6139
  %v6141 = vpop.f32.mrb[0].mxu0
  %6142 = vdwg.mxu0
  %v6144 = vsel %vm5533, %v725, 0
  %v6147 = vsel %vm5533, %v730, 0
  %v6150 = vsel %vm5533, %v2525, 0
  %v6153 = vsel %vm5533, %v2530, 0
  %6155 = vmatprep.subr.mxu0 0.0
  %6156 = vmatpush1.xpose.msra.mxu0 %v6150
  %6157 = vmatprep.subr.mxu0 0.0
  %6158 = vmatpush1.xpose.msra.mxu0 %v6153
  %6159 = vmatprep.subr.mxu0 0.0
  %6160 = vmatpush1.xpose.msra.mxu0 0.0
  %6161 = vmatprep.subr.mxu0 0.0
  %6162 = vmatpush1.xpose.msra.mxu0 0.0
  %6163 = vmatprep.subr.mxu0 0.0
  %6164 = vmatpush1.xpose.msra.mxu0 0.0
  %6165 = vmatprep.subr.mxu0 0.0
  %6166 = vmatpush1.xpose.msra.mxu0 0.0
  %6167 = vmatprep.subr.mxu0 0.0
  %6168 = vmatpush1.xpose.msra.mxu0 0.0
  %6169 = vmatprep.subr.mxu0 0.0
  %6170 = vmatpush1.xpose.msra.mxu0 0.0
  %6171 = vmatprep.subr.mxu0 0.0
  %6172 = vmatpush1.xpose.msra.mxu0 0.0
  %6173 = vmatprep.subr.mxu0 0.0
  %6174 = vmatpush1.xpose.msra.mxu0 0.0
  %6175 = vmatprep.subr.mxu0 0.0
  %6176 = vmatpush1.xpose.msra.mxu0 0.0
  %6177 = vmatprep.subr.mxu0 0.0
  %6178 = vmatpush1.xpose.msra.mxu0 0.0
  %6179 = vmatprep.subr.mxu0 0.0
  %6180 = vmatpush1.xpose.msra.mxu0 0.0
  %6181 = vmatprep.subr.mxu0 0.0
  %6182 = vmatpush1.xpose.msra.mxu0 0.0
  %6183 = vmatprep.subr.mxu0 0.0
  %6184 = vmatpush1.xpose.msra.mxu0 0.0
  %6185 = vmatprep.subr.mxu0 0.0
  %6186 = vmatpush1.xpose.msra.mxu0 0.0
  %6187 = vmatprep.subr.mxu0 0.0
  %6188 = vmatpush1.xpose.msra.mxu0 0.0
  %6189 = vmatprep.subr.mxu0 0.0
  %6190 = vmatpush1.xpose.msra.mxu0 0.0
  %6191 = vmatprep.subr.mxu0 0.0
  %6192 = vmatpush1.xpose.msra.mxu0 0.0
  %6193 = vmatprep.subr.mxu0 0.0
  %6194 = vmatpush1.xpose.msra.mxu0 0.0
  %6195 = vmatprep.subr.mxu0 0.0
  %6196 = vmatpush1.xpose.msra.mxu0 0.0
  %6197 = vmatprep.subr.mxu0 0.0
  %6198 = vmatpush1.xpose.msra.mxu0 0.0
  %6199 = vmatprep.subr.mxu0 0.0
  %6200 = vmatpush1.xpose.msra.mxu0 0.0
  %6201 = vmatprep.subr.mxu0 0.0
  %6202 = vmatpush1.xpose.msra.mxu0 0.0
  %6203 = vmatprep.subr.mxu0 0.0
  %6204 = vmatpush1.xpose.msra.mxu0 0.0
  %6205 = vmatprep.subr.mxu0 0.0
  %6206 = vmatpush1.xpose.msra.mxu0 0.0
  %6207 = vmatprep.subr.mxu0 0.0
  %6208 = vmatpush1.xpose.msra.mxu0 0.0
  %6209 = vmatprep.subr.mxu0 0.0
  %6210 = vmatpush1.xpose.msra.mxu0 0.0
  %6211 = vmatprep.subr.mxu0 0.0
  %6212 = vmatpush1.xpose.msra.mxu0 0.0
  %6213 = vmatprep.subr.mxu0 0.0
  %6214 = vmatpush1.xpose.msra.mxu0 0.0
  %6215 = vmatprep.subr.mxu0 0.0
  %6216 = vmatpush1.xpose.msra.mxu0 0.0
  %6217 = vmatprep.subr.mxu0 0.0
  %6218 = vmatpush1.xpose.msra.mxu0 0.0
  %6219 = vmatprep.mubr.f32.mxu0 0.0
  %6220 = vmatmul.mubr.f32.gmra.mrb[0].mxu0 %v6144
  %v6221 = vpop.f32.mrb[0].mxu0
  %v6222 = vadd.f32 0.0, %v6221
  %v6223 = vpop.f32.mrb[0].mxu0
  %6224 = vmatprep.mubr.f32.mxu0 0.0
  %6225 = vmatmul.mubr.f32.gmra.mrb[0].mxu0 %v6147
  %v6226 = vpop.f32.mrb[0].mxu0
  %v6227 = vadd.f32 0.0, %v6226
  %v6228 = vpop.f32.mrb[0].mxu0
  %6229 = vdwg.mxu0
  %v6231 = vsel %vm5533, %v800, 0
  %v6234 = vsel %vm5533, %v805, 0
  %v6237 = vsel %vm5533, %v2600, 0
  %v6240 = vsel %vm5533, %v2605, 0
  %6242 = vmatprep.subr.mxu0 0.0
  %6243 = vmatpush1.xpose.msra.mxu0 %v6237
  %6244 = vmatprep.subr.mxu0 0.0
  %6245 = vmatpush1.xpose.msra.mxu0 %v6240
  %6246 = vmatprep.subr.mxu0 0.0
  %6247 = vmatpush1.xpose.msra.mxu0 0.0
  %6248 = vmatprep.subr.mxu0 0.0
  %6249 = vmatpush1.xpose.msra.mxu0 0.0
  %6250 = vmatprep.subr.mxu0 0.0
  %6251 = vmatpush1.xpose.msra.mxu0 0.0
  %6252 = vmatprep.subr.mxu0 0.0
  %6253 = vmatpush1.xpose.msra.mxu0 0.0
  %6254 = vmatprep.subr.mxu0 0.0
  %6255 = vmatpush1.xpose.msra.mxu0 0.0
  %6256 = vmatprep.subr.mxu0 0.0
  %6257 = vmatpush1.xpose.msra.mxu0 0.0
  %6258 = vmatprep.subr.mxu0 0.0
  %6259 = vmatpush1.xpose.msra.mxu0 0.0
  %6260 = vmatprep.subr.mxu0 0.0
  %6261 = vmatpush1.xpose.msra.mxu0 0.0
  %6262 = vmatprep.subr.mxu0 0.0
  %6263 = vmatpush1.xpose.msra.mxu0 0.0
  %6264 = vmatprep.subr.mxu0 0.0
  %6265 = vmatpush1.xpose.msra.mxu0 0.0
  %6266 = vmatprep.subr.mxu0 0.0
  %6267 = vmatpush1.xpose.msra.mxu0 0.0
  %6268 = vmatprep.subr.mxu0 0.0
  %6269 = vmatpush1.xpose.msra.mxu0 0.0
  %6270 = vmatprep.subr.mxu0 0.0
  %6271 = vmatpush1.xpose.msra.mxu0 0.0
  %6272 = vmatprep.subr.mxu0 0.0
  %6273 = vmatpush1.xpose.msra.mxu0 0.0
  %6274 = vmatprep.subr.mxu0 0.0
  %6275 = vmatpush1.xpose.msra.mxu0 0.0
  %6276 = vmatprep.subr.mxu0 0.0
  %6277 = vmatpush1.xpose.msra.mxu0 0.0
  %6278 = vmatprep.subr.mxu0 0.0
  %6279 = vmatpush1.xpose.msra.mxu0 0.0
  %6280 = vmatprep.subr.mxu0 0.0
  %6281 = vmatpush1.xpose.msra.mxu0 0.0
  %6282 = vmatprep.subr.mxu0 0.0
  %6283 = vmatpush1.xpose.msra.mxu0 0.0
  %6284 = vmatprep.subr.mxu0 0.0
  %6285 = vmatpush1.xpose.msra.mxu0 0.0
  %6286 = vmatprep.subr.mxu0 0.0
  %6287 = vmatpush1.xpose.msra.mxu0 0.0
  %6288 = vmatprep.subr.mxu0 0.0
  %6289 = vmatpush1.xpose.msra.mxu0 0.0
  %6290 = vmatprep.subr.mxu0 0.0
  %6291 = vmatpush1.xpose.msra.mxu0 0.0
  %6292 = vmatprep.subr.mxu0 0.0
  %6293 = vmatpush1.xpose.msra.mxu0 0.0
  %6294 = vmatprep.subr.mxu0 0.0
  %6295 = vmatpush1.xpose.msra.mxu0 0.0
  %6296 = vmatprep.subr.mxu0 0.0
  %6297 = vmatpush1.xpose.msra.mxu0 0.0
  %6298 = vmatprep.subr.mxu0 0.0
  %6299 = vmatpush1.xpose.msra.mxu0 0.0
  %6300 = vmatprep.subr.mxu0 0.0
  %6301 = vmatpush1.xpose.msra.mxu0 0.0
  %6302 = vmatprep.subr.mxu0 0.0
  %6303 = vmatpush1.xpose.msra.mxu0 0.0
  %6304 = vmatprep.subr.mxu0 0.0
  %6305 = vmatpush1.xpose.msra.mxu0 0.0
  %6306 = vmatprep.mubr.f32.mxu0 0.0
  %6307 = vmatmul.mubr.f32.gmra.mrb[0].mxu0 %v6231
  %v6308 = vpop.f32.mrb[0].mxu0
  %v6309 = vadd.f32 0.0, %v6308
  %v6310 = vpop.f32.mrb[0].mxu0
  %6311 = vmatprep.mubr.f32.mxu0 0.0
  %6312 = vmatmul.mubr.f32.gmra.mrb[0].mxu0 %v6234
  %v6313 = vpop.f32.mrb[0].mxu0
  %v6314 = vadd.f32 0.0, %v6313
  %v6315 = vpop.f32.mrb[0].mxu0
  %6316 = vdwg.mxu0
  %v6318 = vsel %vm5533, %v875, 0
  %v6321 = vsel %vm5533, %v880, 0
  %v6324 = vsel %vm5533, %v2675, 0
  %v6327 = vsel %vm5533, %v2680, 0
  %6329 = vmatprep.subr.mxu0 0.0
  %6330 = vmatpush1.xpose.msra.mxu0 %v6324
  %6331 = vmatprep.subr.mxu0 0.0
  %6332 = vmatpush1.xpose.msra.mxu0 %v6327
  %6333 = vmatprep.subr.mxu0 0.0
  %6334 = vmatpush1.xpose.msra.mxu0 0.0
  %6335 = vmatprep.subr.mxu0 0.0
  %6336 = vmatpush1.xpose.msra.mxu0 0.0
  %6337 = vmatprep.subr.mxu0 0.0
  %6338 = vmatpush1.xpose.msra.mxu0 0.0
  %6339 = vmatprep.subr.mxu0 0.0
  %6340 = vmatpush1.xpose.msra.mxu0 0.0
  %6341 = vmatprep.subr.mxu0 0.0
  %6342 = vmatpush1.xpose.msra.mxu0 0.0
  %6343 = vmatprep.subr.mxu0 0.0
  %6344 = vmatpush1.xpose.msra.mxu0 0.0
  %6345 = vmatprep.subr.mxu0 0.0
  %6346 = vmatpush1.xpose.msra.mxu0 0.0
  %6347 = vmatprep.subr.mxu0 0.0
  %6348 = vmatpush1.xpose.msra.mxu0 0.0
  %6349 = vmatprep.subr.mxu0 0.0
  %6350 = vmatpush1.xpose.msra.mxu0 0.0
  %6351 = vmatprep.subr.mxu0 0.0
  %6352 = vmatpush1.xpose.msra.mxu0 0.0
  %6353 = vmatprep.subr.mxu0 0.0
  %6354 = vmatpush1.xpose.msra.mxu0 0.0
  %6355 = vmatprep.subr.mxu0 0.0
  %6356 = vmatpush1.xpose.msra.mxu0 0.0
  %6357 = vmatprep.subr.mxu0 0.0
  %6358 = vmatpush1.xpose.msra.mxu0 0.0
  %6359 = vmatprep.subr.mxu0 0.0
  %6360 = vmatpush1.xpose.msra.mxu0 0.0
  %6361 = vmatprep.subr.mxu0 0.0
  %6362 = vmatpush1.xpose.msra.mxu0 0.0
  %6363 = vmatprep.subr.mxu0 0.0
  %6364 = vmatpush1.xpose.msra.mxu0 0.0
  %6365 = vmatprep.subr.mxu0 0.0
  %6366 = vmatpush1.xpose.msra.mxu0 0.0
  %6367 = vmatprep.subr.mxu0 0.0
  %6368 = vmatpush1.xpose.msra.mxu0 0.0
  %6369 = vmatprep.subr.mxu0 0.0
  %6370 = vmatpush1.xpose.msra.mxu0 0.0
  %6371 = vmatprep.subr.mxu0 0.0
  %6372 = vmatpush1.xpose.msra.mxu0 0.0
  %6373 = vmatprep.subr.mxu0 0.0
  %6374 = vmatpush1.xpose.msra.mxu0 0.0
  %6375 = vmatprep.subr.mxu0 0.0
  %6376 = vmatpush1.xpose.msra.mxu0 0.0
  %6377 = vmatprep.subr.mxu0 0.0
  %6378 = vmatpush1.xpose.msra.mxu0 0.0
  %6379 = vmatprep.subr.mxu0 0.0
  %6380 = vmatpush1.xpose.msra.mxu0 0.0
  %6381 = vmatprep.subr.mxu0 0.0
  %6382 = vmatpush1.xpose.msra.mxu0 0.0
  %6383 = vmatprep.subr.mxu0 0.0
  %6384 = vmatpush1.xpose.msra.mxu0 0.0
  %6385 = vmatprep.subr.mxu0 0.0
  %6386 = vmatpush1.xpose.msra.mxu0 0.0
  %6387 = vmatprep.subr.mxu0 0.0
  %6388 = vmatpush1.xpose.msra.mxu0 0.0
  %6389 = vmatprep.subr.mxu0 0.0
  %6390 = vmatpush1.xpose.msra.mxu0 0.0
  %6391 = vmatprep.subr.mxu0 0.0
  %6392 = vmatpush1.xpose.msra.mxu0 0.0
  %6393 = vmatprep.mubr.f32.mxu0 0.0
  %6394 = vmatmul.mubr.f32.gmra.mrb[0].mxu0 %v6318
  %v6395 = vpop.f32.mrb[0].mxu0
  %v6396 = vadd.f32 0.0, %v6395
  %v6397 = vpop.f32.mrb[0].mxu0
  %6398 = vmatprep.mubr.f32.mxu0 0.0
  %6399 = vmatmul.mubr.f32.gmra.mrb[0].mxu0 %v6321
  %v6400 = vpop.f32.mrb[0].mxu0
  %v6401 = vadd.f32 0.0, %v6400
  %v6402 = vpop.f32.mrb[0].mxu0
  %6403 = vdwg.mxu0
  %v6405 = vsel %vm5533, %v950, 0
  %v6408 = vsel %vm5533, %v955, 0
  %v6411 = vsel %vm5533, %v2750, 0
  %v6414 = vsel %vm5533, %v2755, 0
  %6416 = vmatprep.subr.mxu0 0.0
  %6417 = vmatpush1.xpose.msra.mxu0 %v6411
  %6418 = vmatprep.subr.mxu0 0.0
  %6419 = vmatpush1.xpose.msra.mxu0 %v6414
  %6420 = vmatprep.subr.mxu0 0.0
  %6421 = vmatpush1.xpose.msra.mxu0 0.0
  %6422 = vmatprep.subr.mxu0 0.0
  %6423 = vmatpush1.xpose.msra.mxu0 0.0
  %6424 = vmatprep.subr.mxu0 0.0
  %6425 = vmatpush1.xpose.msra.mxu0 0.0
  %6426 = vmatprep.subr.mxu0 0.0
  %6427 = vmatpush1.xpose.msra.mxu0 0.0
  %6428 = vmatprep.subr.mxu0 0.0
  %6429 = vmatpush1.xpose.msra.mxu0 0.0
  %6430 = vmatprep.subr.mxu0 0.0
  %6431 = vmatpush1.xpose.msra.mxu0 0.0
  %6432 = vmatprep.subr.mxu0 0.0
  %6433 = vmatpush1.xpose.msra.mxu0 0.0
  %6434 = vmatprep.subr.mxu0 0.0
  %6435 = vmatpush1.xpose.msra.mxu0 0.0
  %6436 = vmatprep.subr.mxu0 0.0
  %6437 = vmatpush1.xpose.msra.mxu0 0.0
  %6438 = vmatprep.subr.mxu0 0.0
  %6439 = vmatpush1.xpose.msra.mxu0 0.0
  %6440 = vmatprep.subr.mxu0 0.0
  %6441 = vmatpush1.xpose.msra.mxu0 0.0
  %6442 = vmatprep.subr.mxu0 0.0
  %6443 = vmatpush1.xpose.msra.mxu0 0.0
  %6444 = vmatprep.subr.mxu0 0.0
  %6445 = vmatpush1.xpose.msra.mxu0 0.0
  %6446 = vmatprep.subr.mxu0 0.0
  %6447 = vmatpush1.xpose.msra.mxu0 0.0
  %6448 = vmatprep.subr.mxu0 0.0
  %6449 = vmatpush1.xpose.msra.mxu0 0.0
  %6450 = vmatprep.subr.mxu0 0.0
  %6451 = vmatpush1.xpose.msra.mxu0 0.0
  %6452 = vmatprep.subr.mxu0 0.0
  %6453 = vmatpush1.xpose.msra.mxu0 0.0
  %6454 = vmatprep.subr.mxu0 0.0
  %6455 = vmatpush1.xpose.msra.mxu0 0.0
  %6456 = vmatprep.subr.mxu0 0.0
  %6457 = vmatpush1.xpose.msra.mxu0 0.0
  %6458 = vmatprep.subr.mxu0 0.0
  %6459 = vmatpush1.xpose.msra.mxu0 0.0
  %6460 = vmatprep.subr.mxu0 0.0
  %6461 = vmatpush1.xpose.msra.mxu0 0.0
  %6462 = vmatprep.subr.mxu0 0.0
  %6463 = vmatpush1.xpose.msra.mxu0 0.0
  %6464 = vmatprep.subr.mxu0 0.0
  %6465 = vmatpush1.xpose.msra.mxu0 0.0
  %6466 = vmatprep.subr.mxu0 0.0
  %6467 = vmatpush1.xpose.msra.mxu0 0.0
  %6468 = vmatprep.subr.mxu0 0.0
  %6469 = vmatpush1.xpose.msra.mxu0 0.0
  %6470 = vmatprep.subr.mxu0 0.0
  %6471 = vmatpush1.xpose.msra.mxu0 0.0
  %6472 = vmatprep.subr.mxu0 0.0
  %6473 = vmatpush1.xpose.msra.mxu0 0.0
  %6474 = vmatprep.subr.mxu0 0.0
  %6475 = vmatpush1.xpose.msra.mxu0 0.0
  %6476 = vmatprep.subr.mxu0 0.0
  %6477 = vmatpush1.xpose.msra.mxu0 0.0
  %6478 = vmatprep.subr.mxu0 0.0
  %6479 = vmatpush1.xpose.msra.mxu0 0.0
  %6480 = vmatprep.mubr.f32.mxu0 0.0
  %6481 = vmatmul.mubr.f32.gmra.mrb[0].mxu0 %v6405
  %v6482 = vpop.f32.mrb[0].mxu0
  %v6483 = vadd.f32 0.0, %v6482
  %v6484 = vpop.f32.mrb[0].mxu0
  %6485 = vmatprep.mubr.f32.mxu0 0.0
  %6486 = vmatmul.mubr.f32.gmra.mrb[0].mxu0 %v6408
  %v6487 = vpop.f32.mrb[0].mxu0
  %v6488 = vadd.f32 0.0, %v6487
  %v6489 = vpop.f32.mrb[0].mxu0
  %6490 = vdwg.mxu0
  %v6492 = vsel %vm5533, %v1025, 0
  %v6495 = vsel %vm5533, %v1030, 0
  %v6498 = vsel %vm5533, %v2825, 0
  %v6501 = vsel %vm5533, %v2830, 0
  %6503 = vmatprep.subr.mxu0 0.0
  %6504 = vmatpush1.xpose.msra.mxu0 %v6498
  %6505 = vmatprep.subr.mxu0 0.0
  %6506 = vmatpush1.xpose.msra.mxu0 %v6501
  %6507 = vmatprep.subr.mxu0 0.0
  %6508 = vmatpush1.xpose.msra.mxu0 0.0
  %6509 = vmatprep.subr.mxu0 0.0
  %6510 = vmatpush1.xpose.msra.mxu0 0.0
  %6511 = vmatprep.subr.mxu0 0.0
  %6512 = vmatpush1.xpose.msra.mxu0 0.0
  %6513 = vmatprep.subr.mxu0 0.0
  %6514 = vmatpush1.xpose.msra.mxu0 0.0
  %6515 = vmatprep.subr.mxu0 0.0
  %6516 = vmatpush1.xpose.msra.mxu0 0.0
  %6517 = vmatprep.subr.mxu0 0.0
  %6518 = vmatpush1.xpose.msra.mxu0 0.0
  %6519 = vmatprep.subr.mxu0 0.0
  %6520 = vmatpush1.xpose.msra.mxu0 0.0
  %6521 = vmatprep.subr.mxu0 0.0
  %6522 = vmatpush1.xpose.msra.mxu0 0.0
  %6523 = vmatprep.subr.mxu0 0.0
  %6524 = vmatpush1.xpose.msra.mxu0 0.0
  %6525 = vmatprep.subr.mxu0 0.0
  %6526 = vmatpush1.xpose.msra.mxu0 0.0
  %6527 = vmatprep.subr.mxu0 0.0
  %6528 = vmatpush1.xpose.msra.mxu0 0.0
  %6529 = vmatprep.subr.mxu0 0.0
  %6530 = vmatpush1.xpose.msra.mxu0 0.0
  %6531 = vmatprep.subr.mxu0 0.0
  %6532 = vmatpush1.xpose.msra.mxu0 0.0
  %6533 = vmatprep.subr.mxu0 0.0
  %6534 = vmatpush1.xpose.msra.mxu0 0.0
  %6535 = vmatprep.subr.mxu0 0.0
  %6536 = vmatpush1.xpose.msra.mxu0 0.0
  %6537 = vmatprep.subr.mxu0 0.0
  %6538 = vmatpush1.xpose.msra.mxu0 0.0
  %6539 = vmatprep.subr.mxu0 0.0
  %6540 = vmatpush1.xpose.msra.mxu0 0.0
  %6541 = vmatprep.subr.mxu0 0.0
  %6542 = vmatpush1.xpose.msra.mxu0 0.0
  %6543 = vmatprep.subr.mxu0 0.0
  %6544 = vmatpush1.xpose.msra.mxu0 0.0
  %6545 = vmatprep.subr.mxu0 0.0
  %6546 = vmatpush1.xpose.msra.mxu0 0.0
  %6547 = vmatprep.subr.mxu0 0.0
  %6548 = vmatpush1.xpose.msra.mxu0 0.0
  %6549 = vmatprep.subr.mxu0 0.0
  %6550 = vmatpush1.xpose.msra.mxu0 0.0
  %6551 = vmatprep.subr.mxu0 0.0
  %6552 = vmatpush1.xpose.msra.mxu0 0.0
  %6553 = vmatprep.subr.mxu0 0.0
  %6554 = vmatpush1.xpose.msra.mxu0 0.0
  %6555 = vmatprep.subr.mxu0 0.0
  %6556 = vmatpush1.xpose.msra.mxu0 0.0
  %6557 = vmatprep.subr.mxu0 0.0
  %6558 = vmatpush1.xpose.msra.mxu0 0.0
  %6559 = vmatprep.subr.mxu0 0.0
  %6560 = vmatpush1.xpose.msra.mxu0 0.0
  %6561 = vmatprep.subr.mxu0 0.0
  %6562 = vmatpush1.xpose.msra.mxu0 0.0
  %6563 = vmatprep.subr.mxu0 0.0
  %6564 = vmatpush1.xpose.msra.mxu0 0.0
  %6565 = vmatprep.subr.mxu0 0.0
  %6566 = vmatpush1.xpose.msra.mxu0 0.0
  %6567 = vmatprep.mubr.f32.mxu0 0.0
  %6568 = vmatmul.mubr.f32.gmra.mrb[0].mxu0 %v6492
  %v6569 = vpop.f32.mrb[0].mxu0
  %v6570 = vadd.f32 0.0, %v6569
  %v6571 = vpop.f32.mrb[0].mxu0
  %6572 = vmatprep.mubr.f32.mxu0 0.0
  %6573 = vmatmul.mubr.f32.gmra.mrb[0].mxu0 %v6495
  %v6574 = vpop.f32.mrb[0].mxu0
  %v6575 = vadd.f32 0.0, %v6574
  %v6576 = vpop.f32.mrb[0].mxu0
  %6577 = vdwg.mxu0
  %v6579 = vsel %vm5533, %v1100, 0
  %v6582 = vsel %vm5533, %v1105, 0
  %v6585 = vsel %vm5533, %v2900, 0
  %v6588 = vsel %vm5533, %v2905, 0
  %6590 = vmatprep.subr.mxu0 0.0
  %6591 = vmatpush1.xpose.msra.mxu0 %v6585
  %6592 = vmatprep.subr.mxu0 0.0
  %6593 = vmatpush1.xpose.msra.mxu0 %v6588
  %6594 = vmatprep.subr.mxu0 0.0
  %6595 = vmatpush1.xpose.msra.mxu0 0.0
  %6596 = vmatprep.subr.mxu0 0.0
  %6597 = vmatpush1.xpose.msra.mxu0 0.0
  %6598 = vmatprep.subr.mxu0 0.0
  %6599 = vmatpush1.xpose.msra.mxu0 0.0
  %6600 = vmatprep.subr.mxu0 0.0
  %6601 = vmatpush1.xpose.msra.mxu0 0.0
  %6602 = vmatprep.subr.mxu0 0.0
  %6603 = vmatpush1.xpose.msra.mxu0 0.0
  %6604 = vmatprep.subr.mxu0 0.0
  %6605 = vmatpush1.xpose.msra.mxu0 0.0
  %6606 = vmatprep.subr.mxu0 0.0
  %6607 = vmatpush1.xpose.msra.mxu0 0.0
  %6608 = vmatprep.subr.mxu0 0.0
  %6609 = vmatpush1.xpose.msra.mxu0 0.0
  %6610 = vmatprep.subr.mxu0 0.0
  %6611 = vmatpush1.xpose.msra.mxu0 0.0
  %6612 = vmatprep.subr.mxu0 0.0
  %6613 = vmatpush1.xpose.msra.mxu0 0.0
  %6614 = vmatprep.subr.mxu0 0.0
  %6615 = vmatpush1.xpose.msra.mxu0 0.0
  %6616 = vmatprep.subr.mxu0 0.0
  %6617 = vmatpush1.xpose.msra.mxu0 0.0
  %6618 = vmatprep.subr.mxu0 0.0
  %6619 = vmatpush1.xpose.msra.mxu0 0.0
  %6620 = vmatprep.subr.mxu0 0.0
  %6621 = vmatpush1.xpose.msra.mxu0 0.0
  %6622 = vmatprep.subr.mxu0 0.0
  %6623 = vmatpush1.xpose.msra.mxu0 0.0
  %6624 = vmatprep.subr.mxu0 0.0
  %6625 = vmatpush1.xpose.msra.mxu0 0.0
  %6626 = vmatprep.subr.mxu0 0.0
  %6627 = vmatpush1.xpose.msra.mxu0 0.0
  %6628 = vmatprep.subr.mxu0 0.0
  %6629 = vmatpush1.xpose.msra.mxu0 0.0
  %6630 = vmatprep.subr.mxu0 0.0
  %6631 = vmatpush1.xpose.msra.mxu0 0.0
  %6632 = vmatprep.subr.mxu0 0.0
  %6633 = vmatpush1.xpose.msra.mxu0 0.0
  %6634 = vmatprep.subr.mxu0 0.0
  %6635 = vmatpush1.xpose.msra.mxu0 0.0
  %6636 = vmatprep.subr.mxu0 0.0
  %6637 = vmatpush1.xpose.msra.mxu0 0.0
  %6638 = vmatprep.subr.mxu0 0.0
  %6639 = vmatpush1.xpose.msra.mxu0 0.0
  %6640 = vmatprep.subr.mxu0 0.0
  %6641 = vmatpush1.xpose.msra.mxu0 0.0
  %6642 = vmatprep.subr.mxu0 0.0
  %6643 = vmatpush1.xpose.msra.mxu0 0.0
  %6644 = vmatprep.subr.mxu0 0.0
  %6645 = vmatpush1.xpose.msra.mxu0 0.0
  %6646 = vmatprep.subr.mxu0 0.0
  %6647 = vmatpush1.xpose.msra.mxu0 0.0
  %6648 = vmatprep.subr.mxu0 0.0
  %6649 = vmatpush1.xpose.msra.mxu0 0.0
  %6650 = vmatprep.subr.mxu0 0.0
  %6651 = vmatpush1.xpose.msra.mxu0 0.0
  %6652 = vmatprep.subr.mxu0 0.0
  %6653 = vmatpush1.xpose.msra.mxu0 0.0
  %6654 = vmatprep.mubr.f32.mxu0 0.0
  %6655 = vmatmul.mubr.f32.gmra.mrb[0].mxu0 %v6579
  %v6656 = vpop.f32.mrb[0].mxu0
  %v6657 = vadd.f32 0.0, %v6656
  %v6658 = vpop.f32.mrb[0].mxu0
  %6659 = vmatprep.mubr.f32.mxu0 0.0
  %6660 = vmatmul.mubr.f32.gmra.mrb[0].mxu0 %v6582
  %v6661 = vpop.f32.mrb[0].mxu0
  %v6662 = vadd.f32 0.0, %v6661
  %v6663 = vpop.f32.mrb[0].mxu0
  %6664 = vdwg.mxu0
  %v6666 = vsel %vm5533, %v1175, 0
  %v6669 = vsel %vm5533, %v1180, 0
  %v6672 = vsel %vm5533, %v2975, 0
  %v6675 = vsel %vm5533, %v2980, 0
  %6677 = vmatprep.subr.mxu0 0.0
  %6678 = vmatpush1.xpose.msra.mxu0 %v6672
  %6679 = vmatprep.subr.mxu0 0.0
  %6680 = vmatpush1.xpose.msra.mxu0 %v6675
  %6681 = vmatprep.subr.mxu0 0.0
  %6682 = vmatpush1.xpose.msra.mxu0 0.0
  %6683 = vmatprep.subr.mxu0 0.0
  %6684 = vmatpush1.xpose.msra.mxu0 0.0
  %6685 = vmatprep.subr.mxu0 0.0
  %6686 = vmatpush1.xpose.msra.mxu0 0.0
  %6687 = vmatprep.subr.mxu0 0.0
  %6688 = vmatpush1.xpose.msra.mxu0 0.0
  %6689 = vmatprep.subr.mxu0 0.0
  %6690 = vmatpush1.xpose.msra.mxu0 0.0
  %6691 = vmatprep.subr.mxu0 0.0
  %6692 = vmatpush1.xpose.msra.mxu0 0.0
  %6693 = vmatprep.subr.mxu0 0.0
  %6694 = vmatpush1.xpose.msra.mxu0 0.0
  %6695 = vmatprep.subr.mxu0 0.0
  %6696 = vmatpush1.xpose.msra.mxu0 0.0
  %6697 = vmatprep.subr.mxu0 0.0
  %6698 = vmatpush1.xpose.msra.mxu0 0.0
  %6699 = vmatprep.subr.mxu0 0.0
  %6700 = vmatpush1.xpose.msra.mxu0 0.0
  %6701 = vmatprep.subr.mxu0 0.0
  %6702 = vmatpush1.xpose.msra.mxu0 0.0
  %6703 = vmatprep.subr.mxu0 0.0
  %6704 = vmatpush1.xpose.msra.mxu0 0.0
  %6705 = vmatprep.subr.mxu0 0.0
  %6706 = vmatpush1.xpose.msra.mxu0 0.0
  %6707 = vmatprep.subr.mxu0 0.0
  %6708 = vmatpush1.xpose.msra.mxu0 0.0
  %6709 = vmatprep.subr.mxu0 0.0
  %6710 = vmatpush1.xpose.msra.mxu0 0.0
  %6711 = vmatprep.subr.mxu0 0.0
  %6712 = vmatpush1.xpose.msra.mxu0 0.0
  %6713 = vmatprep.subr.mxu0 0.0
  %6714 = vmatpush1.xpose.msra.mxu0 0.0
  %6715 = vmatprep.subr.mxu0 0.0
  %6716 = vmatpush1.xpose.msra.mxu0 0.0
  %6717 = vmatprep.subr.mxu0 0.0
  %6718 = vmatpush1.xpose.msra.mxu0 0.0
  %6719 = vmatprep.subr.mxu0 0.0
  %6720 = vmatpush1.xpose.msra.mxu0 0.0
  %6721 = vmatprep.subr.mxu0 0.0
  %6722 = vmatpush1.xpose.msra.mxu0 0.0
  %6723 = vmatprep.subr.mxu0 0.0
  %6724 = vmatpush1.xpose.msra.mxu0 0.0
  %6725 = vmatprep.subr.mxu0 0.0
  %6726 = vmatpush1.xpose.msra.mxu0 0.0
  %6727 = vmatprep.subr.mxu0 0.0
  %6728 = vmatpush1.xpose.msra.mxu0 0.0
  %6729 = vmatprep.subr.mxu0 0.0
  %6730 = vmatpush1.xpose.msra.mxu0 0.0
  %6731 = vmatprep.subr.mxu0 0.0
  %6732 = vmatpush1.xpose.msra.mxu0 0.0
  %6733 = vmatprep.subr.mxu0 0.0
  %6734 = vmatpush1.xpose.msra.mxu0 0.0
  %6735 = vmatprep.subr.mxu0 0.0
  %6736 = vmatpush1.xpose.msra.mxu0 0.0
  %6737 = vmatprep.subr.mxu0 0.0
  %6738 = vmatpush1.xpose.msra.mxu0 0.0
  %6739 = vmatprep.subr.mxu0 0.0
  %6740 = vmatpush1.xpose.msra.mxu0 0.0
  %6741 = vmatprep.mubr.f32.mxu0 0.0
  %6742 = vmatmul.mubr.f32.gmra.mrb[0].mxu0 %v6666
  %v6743 = vpop.f32.mrb[0].mxu0
  %v6744 = vadd.f32 0.0, %v6743
  %v6745 = vpop.f32.mrb[0].mxu0
  %6746 = vmatprep.mubr.f32.mxu0 0.0
  %6747 = vmatmul.mubr.f32.gmra.mrb[0].mxu0 %v6669
  %v6748 = vpop.f32.mrb[0].mxu0
  %v6749 = vadd.f32 0.0, %v6748
  %v6750 = vpop.f32.mrb[0].mxu0
  %6751 = vdwg.mxu0
  %v6753 = vsel %vm5533, %v1250, 0
  %v6756 = vsel %vm5533, %v1255, 0
  %v6759 = vsel %vm5533, %v3050, 0
  %v6762 = vsel %vm5533, %v3055, 0
  %6764 = vmatprep.subr.mxu0 0.0
  %6765 = vmatpush1.xpose.msra.mxu0 %v6759
  %6766 = vmatprep.subr.mxu0 0.0
  %6767 = vmatpush1.xpose.msra.mxu0 %v6762
  %6768 = vmatprep.subr.mxu0 0.0
  %6769 = vmatpush1.xpose.msra.mxu0 0.0
  %6770 = vmatprep.subr.mxu0 0.0
  %6771 = vmatpush1.xpose.msra.mxu0 0.0
  %6772 = vmatprep.subr.mxu0 0.0
  %6773 = vmatpush1.xpose.msra.mxu0 0.0
  %6774 = vmatprep.subr.mxu0 0.0
  %6775 = vmatpush1.xpose.msra.mxu0 0.0
  %6776 = vmatprep.subr.mxu0 0.0
  %6777 = vmatpush1.xpose.msra.mxu0 0.0
  %6778 = vmatprep.subr.mxu0 0.0
  %6779 = vmatpush1.xpose.msra.mxu0 0.0
  %6780 = vmatprep.subr.mxu0 0.0
  %6781 = vmatpush1.xpose.msra.mxu0 0.0
  %6782 = vmatprep.subr.mxu0 0.0
  %6783 = vmatpush1.xpose.msra.mxu0 0.0
  %6784 = vmatprep.subr.mxu0 0.0
  %6785 = vmatpush1.xpose.msra.mxu0 0.0
  %6786 = vmatprep.subr.mxu0 0.0
  %6787 = vmatpush1.xpose.msra.mxu0 0.0
  %6788 = vmatprep.subr.mxu0 0.0
  %6789 = vmatpush1.xpose.msra.mxu0 0.0
  %6790 = vmatprep.subr.mxu0 0.0
  %6791 = vmatpush1.xpose.msra.mxu0 0.0
  %6792 = vmatprep.subr.mxu0 0.0
  %6793 = vmatpush1.xpose.msra.mxu0 0.0
  %6794 = vmatprep.subr.mxu0 0.0
  %6795 = vmatpush1.xpose.msra.mxu0 0.0
  %6796 = vmatprep.subr.mxu0 0.0
  %6797 = vmatpush1.xpose.msra.mxu0 0.0
  %6798 = vmatprep.subr.mxu0 0.0
  %6799 = vmatpush1.xpose.msra.mxu0 0.0
  %6800 = vmatprep.subr.mxu0 0.0
  %6801 = vmatpush1.xpose.msra.mxu0 0.0
  %6802 = vmatprep.subr.mxu0 0.0
  %6803 = vmatpush1.xpose.msra.mxu0 0.0
  %6804 = vmatprep.subr.mxu0 0.0
  %6805 = vmatpush1.xpose.msra.mxu0 0.0
  %6806 = vmatprep.subr.mxu0 0.0
  %6807 = vmatpush1.xpose.msra.mxu0 0.0
  %6808 = vmatprep.subr.mxu0 0.0
  %6809 = vmatpush1.xpose.msra.mxu0 0.0
  %6810 = vmatprep.subr.mxu0 0.0
  %6811 = vmatpush1.xpose.msra.mxu0 0.0
  %6812 = vmatprep.subr.mxu0 0.0
  %6813 = vmatpush1.xpose.msra.mxu0 0.0
  %6814 = vmatprep.subr.mxu0 0.0
  %6815 = vmatpush1.xpose.msra.mxu0 0.0
  %6816 = vmatprep.subr.mxu0 0.0
  %6817 = vmatpush1.xpose.msra.mxu0 0.0
  %6818 = vmatprep.subr.mxu0 0.0
  %6819 = vmatpush1.xpose.msra.mxu0 0.0
  %6820 = vmatprep.subr.mxu0 0.0
  %6821 = vmatpush1.xpose.msra.mxu0 0.0
  %6822 = vmatprep.subr.mxu0 0.0
  %6823 = vmatpush1.xpose.msra.mxu0 0.0
  %6824 = vmatprep.subr.mxu0 0.0
  %6825 = vmatpush1.xpose.msra.mxu0 0.0
  %6826 = vmatprep.subr.mxu0 0.0
  %6827 = vmatpush1.xpose.msra.mxu0 0.0
  %6828 = vmatprep.mubr.f32.mxu0 0.0
  %6829 = vmatmul.mubr.f32.gmra.mrb[0].mxu0 %v6753
  %v6830 = vpop.f32.mrb[0].mxu0
  %v6831 = vadd.f32 0.0, %v6830
  %v6832 = vpop.f32.mrb[0].mxu0
  %6833 = vmatprep.mubr.f32.mxu0 0.0
  %6834 = vmatmul.mubr.f32.gmra.mrb[0].mxu0 %v6756
  %v6835 = vpop.f32.mrb[0].mxu0
  %v6836 = vadd.f32 0.0, %v6835
  %v6837 = vpop.f32.mrb[0].mxu0
  %6838 = vdwg.mxu0
  %v6840 = vsel %vm5533, %v1325, 0
  %v6843 = vsel %vm5533, %v1330, 0
  %v6846 = vsel %vm5533, %v3125, 0
  %v6849 = vsel %vm5533, %v3130, 0
  %6851 = vmatprep.subr.mxu0 0.0
  %6852 = vmatpush1.xpose.msra.mxu0 %v6846
  %6853 = vmatprep.subr.mxu0 0.0
  %6854 = vmatpush1.xpose.msra.mxu0 %v6849
  %6855 = vmatprep.subr.mxu0 0.0
  %6856 = vmatpush1.xpose.msra.mxu0 0.0
  %6857 = vmatprep.subr.mxu0 0.0
  %6858 = vmatpush1.xpose.msra.mxu0 0.0
  %6859 = vmatprep.subr.mxu0 0.0
  %6860 = vmatpush1.xpose.msra.mxu0 0.0
  %6861 = vmatprep.subr.mxu0 0.0
  %6862 = vmatpush1.xpose.msra.mxu0 0.0
  %6863 = vmatprep.subr.mxu0 0.0
  %6864 = vmatpush1.xpose.msra.mxu0 0.0
  %6865 = vmatprep.subr.mxu0 0.0
  %6866 = vmatpush1.xpose.msra.mxu0 0.0
  %6867 = vmatprep.subr.mxu0 0.0
  %6868 = vmatpush1.xpose.msra.mxu0 0.0
  %6869 = vmatprep.subr.mxu0 0.0
  %6870 = vmatpush1.xpose.msra.mxu0 0.0
  %6871 = vmatprep.subr.mxu0 0.0
  %6872 = vmatpush1.xpose.msra.mxu0 0.0
  %6873 = vmatprep.subr.mxu0 0.0
  %6874 = vmatpush1.xpose.msra.mxu0 0.0
  %6875 = vmatprep.subr.mxu0 0.0
  %6876 = vmatpush1.xpose.msra.mxu0 0.0
  %6877 = vmatprep.subr.mxu0 0.0
  %6878 = vmatpush1.xpose.msra.mxu0 0.0
  %6879 = vmatprep.subr.mxu0 0.0
  %6880 = vmatpush1.xpose.msra.mxu0 0.0
  %6881 = vmatprep.subr.mxu0 0.0
  %6882 = vmatpush1.xpose.msra.mxu0 0.0
  %6883 = vmatprep.subr.mxu0 0.0
  %6884 = vmatpush1.xpose.msra.mxu0 0.0
  %6885 = vmatprep.subr.mxu0 0.0
  %6886 = vmatpush1.xpose.msra.mxu0 0.0
  %6887 = vmatprep.subr.mxu0 0.0
  %6888 = vmatpush1.xpose.msra.mxu0 0.0
  %6889 = vmatprep.subr.mxu0 0.0
  %6890 = vmatpush1.xpose.msra.mxu0 0.0
  %6891 = vmatprep.subr.mxu0 0.0
  %6892 = vmatpush1.xpose.msra.mxu0 0.0
  %6893 = vmatprep.subr.mxu0 0.0
  %6894 = vmatpush1.xpose.msra.mxu0 0.0
  %6895 = vmatprep.subr.mxu0 0.0
  %6896 = vmatpush1.xpose.msra.mxu0 0.0
  %6897 = vmatprep.subr.mxu0 0.0
  %6898 = vmatpush1.xpose.msra.mxu0 0.0
  %6899 = vmatprep.subr.mxu0 0.0
  %6900 = vmatpush1.xpose.msra.mxu0 0.0
  %6901 = vmatprep.subr.mxu0 0.0
  %6902 = vmatpush1.xpose.msra.mxu0 0.0
  %6903 = vmatprep.subr.mxu0 0.0
  %6904 = vmatpush1.xpose.msra.mxu0 0.0
  %6905 = vmatprep.subr.mxu0 0.0
  %6906 = vmatpush1.xpose.msra.mxu0 0.0
  %6907 = vmatprep.subr.mxu0 0.0
  %6908 = vmatpush1.xpose.msra.mxu0 0.0
  %6909 = vmatprep.subr.mxu0 0.0
  %6910 = vmatpush1.xpose.msra.mxu0 0.0
  %6911 = vmatprep.subr.mxu0 0.0
  %6912 = vmatpush1.xpose.msra.mxu0 0.0
  %6913 = vmatprep.subr.mxu0 0.0
  %6914 = vmatpush1.xpose.msra.mxu0 0.0
  %6915 = vmatprep.mubr.f32.mxu0 0.0
  %6916 = vmatmul.mubr.f32.gmra.mrb[0].mxu0 %v6840
  %v6917 = vpop.f32.mrb[0].mxu0
  %v6918 = vadd.f32 0.0, %v6917
  %v6919 = vpop.f32.mrb[0].mxu0
  %6920 = vmatprep.mubr.f32.mxu0 0.0
  %6921 = vmatmul.mubr.f32.gmra.mrb[0].mxu0 %v6843
  %v6922 = vpop.f32.mrb[0].mxu0
  %v6923 = vadd.f32 0.0, %v6922
  %v6924 = vpop.f32.mrb[0].mxu0
  %6925 = vdwg.mxu0
  %v6927 = vsel %vm5533, %v1400, 0
  %v6930 = vsel %vm5533, %v1405, 0
  %v6933 = vsel %vm5533, %v3200, 0
  %v6936 = vsel %vm5533, %v3205, 0
  %6938 = vmatprep.subr.mxu0 0.0
  %6939 = vmatpush1.xpose.msra.mxu0 %v6933
  %6940 = vmatprep.subr.mxu0 0.0
  %6941 = vmatpush1.xpose.msra.mxu0 %v6936
  %6942 = vmatprep.subr.mxu0 0.0
  %6943 = vmatpush1.xpose.msra.mxu0 0.0
  %6944 = vmatprep.subr.mxu0 0.0
  %6945 = vmatpush1.xpose.msra.mxu0 0.0
  %6946 = vmatprep.subr.mxu0 0.0
  %6947 = vmatpush1.xpose.msra.mxu0 0.0
  %6948 = vmatprep.subr.mxu0 0.0
  %6949 = vmatpush1.xpose.msra.mxu0 0.0
  %6950 = vmatprep.subr.mxu0 0.0
  %6951 = vmatpush1.xpose.msra.mxu0 0.0
  %6952 = vmatprep.subr.mxu0 0.0
  %6953 = vmatpush1.xpose.msra.mxu0 0.0
  %6954 = vmatprep.subr.mxu0 0.0
  %6955 = vmatpush1.xpose.msra.mxu0 0.0
  %6956 = vmatprep.subr.mxu0 0.0
  %6957 = vmatpush1.xpose.msra.mxu0 0.0
  %6958 = vmatprep.subr.mxu0 0.0
  %6959 = vmatpush1.xpose.msra.mxu0 0.0
  %6960 = vmatprep.subr.mxu0 0.0
  %6961 = vmatpush1.xpose.msra.mxu0 0.0
  %6962 = vmatprep.subr.mxu0 0.0
  %6963 = vmatpush1.xpose.msra.mxu0 0.0
  %6964 = vmatprep.subr.mxu0 0.0
  %6965 = vmatpush1.xpose.msra.mxu0 0.0
  %6966 = vmatprep.subr.mxu0 0.0
  %6967 = vmatpush1.xpose.msra.mxu0 0.0
  %6968 = vmatprep.subr.mxu0 0.0
  %6969 = vmatpush1.xpose.msra.mxu0 0.0
  %6970 = vmatprep.subr.mxu0 0.0
  %6971 = vmatpush1.xpose.msra.mxu0 0.0
  %6972 = vmatprep.subr.mxu0 0.0
  %6973 = vmatpush1.xpose.msra.mxu0 0.0
  %6974 = vmatprep.subr.mxu0 0.0
  %6975 = vmatpush1.xpose.msra.mxu0 0.0
  %6976 = vmatprep.subr.mxu0 0.0
  %6977 = vmatpush1.xpose.msra.mxu0 0.0
  %6978 = vmatprep.subr.mxu0 0.0
  %6979 = vmatpush1.xpose.msra.mxu0 0.0
  %6980 = vmatprep.subr.mxu0 0.0
  %6981 = vmatpush1.xpose.msra.mxu0 0.0
  %6982 = vmatprep.subr.mxu0 0.0
  %6983 = vmatpush1.xpose.msra.mxu0 0.0
  %6984 = vmatprep.subr.mxu0 0.0
  %6985 = vmatpush1.xpose.msra.mxu0 0.0
  %6986 = vmatprep.subr.mxu0 0.0
  %6987 = vmatpush1.xpose.msra.mxu0 0.0
  %6988 = vmatprep.subr.mxu0 0.0
  %6989 = vmatpush1.xpose.msra.mxu0 0.0
  %6990 = vmatprep.subr.mxu0 0.0
  %6991 = vmatpush1.xpose.msra.mxu0 0.0
  %6992 = vmatprep.subr.mxu0 0.0
  %6993 = vmatpush1.xpose.msra.mxu0 0.0
  %6994 = vmatprep.subr.mxu0 0.0
  %6995 = vmatpush1.xpose.msra.mxu0 0.0
  %6996 = vmatprep.subr.mxu0 0.0
  %6997 = vmatpush1.xpose.msra.mxu0 0.0
  %6998 = vmatprep.subr.mxu0 0.0
  %6999 = vmatpush1.xpose.msra.mxu0 0.0
  %7000 = vmatprep.subr.mxu0 0.0
  %7001 = vmatpush1.xpose.msra.mxu0 0.0
  %7002 = vmatprep.mubr.f32.mxu0 0.0
  %7003 = vmatmul.mubr.f32.gmra.mrb[0].mxu0 %v6927
  %v7004 = vpop.f32.mrb[0].mxu0
  %v7005 = vadd.f32 0.0, %v7004
  %v7006 = vpop.f32.mrb[0].mxu0
  %7007 = vmatprep.mubr.f32.mxu0 0.0
  %7008 = vmatmul.mubr.f32.gmra.mrb[0].mxu0 %v6930
  %v7009 = vpop.f32.mrb[0].mxu0
  %v7010 = vadd.f32 0.0, %v7009
  %v7011 = vpop.f32.mrb[0].mxu0
  %7012 = vdwg.mxu0
  %v7014 = vsel %vm5533, %v1475, 0
  %v7017 = vsel %vm5533, %v1480, 0
  %v7020 = vsel %vm5533, %v3275, 0
  %v7023 = vsel %vm5533, %v3280, 0
  %7025 = vmatprep.subr.mxu0 0.0
  %7026 = vmatpush1.xpose.msra.mxu0 %v7020
  %7027 = vmatprep.subr.mxu0 0.0
  %7028 = vmatpush1.xpose.msra.mxu0 %v7023
  %7029 = vmatprep.subr.mxu0 0.0
  %7030 = vmatpush1.xpose.msra.mxu0 0.0
  %7031 = vmatprep.subr.mxu0 0.0
  %7032 = vmatpush1.xpose.msra.mxu0 0.0
  %7033 = vmatprep.subr.mxu0 0.0
  %7034 = vmatpush1.xpose.msra.mxu0 0.0
  %7035 = vmatprep.subr.mxu0 0.0
  %7036 = vmatpush1.xpose.msra.mxu0 0.0
  %7037 = vmatprep.subr.mxu0 0.0
  %7038 = vmatpush1.xpose.msra.mxu0 0.0
  %7039 = vmatprep.subr.mxu0 0.0
  %7040 = vmatpush1.xpose.msra.mxu0 0.0
  %7041 = vmatprep.subr.mxu0 0.0
  %7042 = vmatpush1.xpose.msra.mxu0 0.0
  %7043 = vmatprep.subr.mxu0 0.0
  %7044 = vmatpush1.xpose.msra.mxu0 0.0
  %7045 = vmatprep.subr.mxu0 0.0
  %7046 = vmatpush1.xpose.msra.mxu0 0.0
  %7047 = vmatprep.subr.mxu0 0.0
  %7048 = vmatpush1.xpose.msra.mxu0 0.0
  %7049 = vmatprep.subr.mxu0 0.0
  %7050 = vmatpush1.xpose.msra.mxu0 0.0
  %7051 = vmatprep.subr.mxu0 0.0
  %7052 = vmatpush1.xpose.msra.mxu0 0.0
  %7053 = vmatprep.subr.mxu0 0.0
  %7054 = vmatpush1.xpose.msra.mxu0 0.0
  %7055 = vmatprep.subr.mxu0 0.0
  %7056 = vmatpush1.xpose.msra.mxu0 0.0
  %7057 = vmatprep.subr.mxu0 0.0
  %7058 = vmatpush1.xpose.msra.mxu0 0.0
  %7059 = vmatprep.subr.mxu0 0.0
  %7060 = vmatpush1.xpose.msra.mxu0 0.0
  %7061 = vmatprep.subr.mxu0 0.0
  %7062 = vmatpush1.xpose.msra.mxu0 0.0
  %7063 = vmatprep.subr.mxu0 0.0
  %7064 = vmatpush1.xpose.msra.mxu0 0.0
  %7065 = vmatprep.subr.mxu0 0.0
  %7066 = vmatpush1.xpose.msra.mxu0 0.0
  %7067 = vmatprep.subr.mxu0 0.0
  %7068 = vmatpush1.xpose.msra.mxu0 0.0
  %7069 = vmatprep.subr.mxu0 0.0
  %7070 = vmatpush1.xpose.msra.mxu0 0.0
  %7071 = vmatprep.subr.mxu0 0.0
  %7072 = vmatpush1.xpose.msra.mxu0 0.0
  %7073 = vmatprep.subr.mxu0 0.0
  %7074 = vmatpush1.xpose.msra.mxu0 0.0
  %7075 = vmatprep.subr.mxu0 0.0
  %7076 = vmatpush1.xpose.msra.mxu0 0.0
  %7077 = vmatprep.subr.mxu0 0.0
  %7078 = vmatpush1.xpose.msra.mxu0 0.0
  %7079 = vmatprep.subr.mxu0 0.0
  %7080 = vmatpush1.xpose.msra.mxu0 0.0
  %7081 = vmatprep.subr.mxu0 0.0
  %7082 = vmatpush1.xpose.msra.mxu0 0.0
  %7083 = vmatprep.subr.mxu0 0.0
  %7084 = vmatpush1.xpose.msra.mxu0 0.0
  %7085 = vmatprep.subr.mxu0 0.0
  %7086 = vmatpush1.xpose.msra.mxu0 0.0
  %7087 = vmatprep.subr.mxu0 0.0
  %7088 = vmatpush1.xpose.msra.mxu0 0.0
  %7089 = vmatprep.mubr.f32.mxu0 0.0
  %7090 = vmatmul.mubr.f32.gmra.mrb[0].mxu0 %v7014
  %v7091 = vpop.f32.mrb[0].mxu0
  %v7092 = vadd.f32 0.0, %v7091
  %v7093 = vpop.f32.mrb[0].mxu0
  %7094 = vmatprep.mubr.f32.mxu0 0.0
  %7095 = vmatmul.mubr.f32.gmra.mrb[0].mxu0 %v7017
  %v7096 = vpop.f32.mrb[0].mxu0
  %v7097 = vadd.f32 0.0, %v7096
  %v7098 = vpop.f32.mrb[0].mxu0
  %7099 = vdwg.mxu0
  %v7101 = vsel %vm5533, %v1550, 0
  %v7104 = vsel %vm5533, %v1555, 0
  %v7107 = vsel %vm5533, %v3350, 0
  %v7110 = vsel %vm5533, %v3355, 0
  %7112 = vmatprep.subr.mxu0 0.0
  %7113 = vmatpush1.xpose.msra.mxu0 %v7107
  %7114 = vmatprep.subr.mxu0 0.0
  %7115 = vmatpush1.xpose.msra.mxu0 %v7110
  %7116 = vmatprep.subr.mxu0 0.0
  %7117 = vmatpush1.xpose.msra.mxu0 0.0
  %7118 = vmatprep.subr.mxu0 0.0
  %7119 = vmatpush1.xpose.msra.mxu0 0.0
  %7120 = vmatprep.subr.mxu0 0.0
  %7121 = vmatpush1.xpose.msra.mxu0 0.0
  %7122 = vmatprep.subr.mxu0 0.0
  %7123 = vmatpush1.xpose.msra.mxu0 0.0
  %7124 = vmatprep.subr.mxu0 0.0
  %7125 = vmatpush1.xpose.msra.mxu0 0.0
  %7126 = vmatprep.subr.mxu0 0.0
  %7127 = vmatpush1.xpose.msra.mxu0 0.0
  %7128 = vmatprep.subr.mxu0 0.0
  %7129 = vmatpush1.xpose.msra.mxu0 0.0
  %7130 = vmatprep.subr.mxu0 0.0
  %7131 = vmatpush1.xpose.msra.mxu0 0.0
  %7132 = vmatprep.subr.mxu0 0.0
  %7133 = vmatpush1.xpose.msra.mxu0 0.0
  %7134 = vmatprep.subr.mxu0 0.0
  %7135 = vmatpush1.xpose.msra.mxu0 0.0
  %7136 = vmatprep.subr.mxu0 0.0
  %7137 = vmatpush1.xpose.msra.mxu0 0.0
  %7138 = vmatprep.subr.mxu0 0.0
  %7139 = vmatpush1.xpose.msra.mxu0 0.0
  %7140 = vmatprep.subr.mxu0 0.0
  %7141 = vmatpush1.xpose.msra.mxu0 0.0
  %7142 = vmatprep.subr.mxu0 0.0
  %7143 = vmatpush1.xpose.msra.mxu0 0.0
  %7144 = vmatprep.subr.mxu0 0.0
  %7145 = vmatpush1.xpose.msra.mxu0 0.0
  %7146 = vmatprep.subr.mxu0 0.0
  %7147 = vmatpush1.xpose.msra.mxu0 0.0
  %7148 = vmatprep.subr.mxu0 0.0
  %7149 = vmatpush1.xpose.msra.mxu0 0.0
  %7150 = vmatprep.subr.mxu0 0.0
  %7151 = vmatpush1.xpose.msra.mxu0 0.0
  %7152 = vmatprep.subr.mxu0 0.0
  %7153 = vmatpush1.xpose.msra.mxu0 0.0
  %7154 = vmatprep.subr.mxu0 0.0
  %7155 = vmatpush1.xpose.msra.mxu0 0.0
  %7156 = vmatprep.subr.mxu0 0.0
  %7157 = vmatpush1.xpose.msra.mxu0 0.0
  %7158 = vmatprep.subr.mxu0 0.0
  %7159 = vmatpush1.xpose.msra.mxu0 0.0
  %7160 = vmatprep.subr.mxu0 0.0
  %7161 = vmatpush1.xpose.msra.mxu0 0.0
  %7162 = vmatprep.subr.mxu0 0.0
  %7163 = vmatpush1.xpose.msra.mxu0 0.0
  %7164 = vmatprep.subr.mxu0 0.0
  %7165 = vmatpush1.xpose.msra.mxu0 0.0
  %7166 = vmatprep.subr.mxu0 0.0
  %7167 = vmatpush1.xpose.msra.mxu0 0.0
  %7168 = vmatprep.subr.mxu0 0.0
  %7169 = vmatpush1.xpose.msra.mxu0 0.0
  %7170 = vmatprep.subr.mxu0 0.0
  %7171 = vmatpush1.xpose.msra.mxu0 0.0
  %7172 = vmatprep.subr.mxu0 0.0
  %7173 = vmatpush1.xpose.msra.mxu0 0.0
  %7174 = vmatprep.subr.mxu0 0.0
  %7175 = vmatpush1.xpose.msra.mxu0 0.0
  %7176 = vmatprep.mubr.f32.mxu0 0.0
  %7177 = vmatmul.mubr.f32.gmra.mrb[0].mxu0 %v7101
  %v7178 = vpop.f32.mrb[0].mxu0
  %v7179 = vadd.f32 0.0, %v7178
  %v7180 = vpop.f32.mrb[0].mxu0
  %7181 = vmatprep.mubr.f32.mxu0 0.0
  %7182 = vmatmul.mubr.f32.gmra.mrb[0].mxu0 %v7104
  %v7183 = vpop.f32.mrb[0].mxu0
  %v7184 = vadd.f32 0.0, %v7183
  %v7185 = vpop.f32.mrb[0].mxu0
  %7186 = vdwg.mxu0
  %v7188 = vsel %vm5533, %v1625, 0
  %v7191 = vsel %vm5533, %v1630, 0
  %v7194 = vsel %vm5533, %v3425, 0
  %v7197 = vsel %vm5533, %v3430, 0
  %7199 = vmatprep.subr.mxu0 0.0
  %7200 = vmatpush1.xpose.msra.mxu0 %v7194
  %7201 = vmatprep.subr.mxu0 0.0
  %7202 = vmatpush1.xpose.msra.mxu0 %v7197
  %7203 = vmatprep.subr.mxu0 0.0
  %7204 = vmatpush1.xpose.msra.mxu0 0.0
  %7205 = vmatprep.subr.mxu0 0.0
  %7206 = vmatpush1.xpose.msra.mxu0 0.0
  %7207 = vmatprep.subr.mxu0 0.0
  %7208 = vmatpush1.xpose.msra.mxu0 0.0
  %7209 = vmatprep.subr.mxu0 0.0
  %7210 = vmatpush1.xpose.msra.mxu0 0.0
  %7211 = vmatprep.subr.mxu0 0.0
  %7212 = vmatpush1.xpose.msra.mxu0 0.0
  %7213 = vmatprep.subr.mxu0 0.0
  %7214 = vmatpush1.xpose.msra.mxu0 0.0
  %7215 = vmatprep.subr.mxu0 0.0
  %7216 = vmatpush1.xpose.msra.mxu0 0.0
  %7217 = vmatprep.subr.mxu0 0.0
  %7218 = vmatpush1.xpose.msra.mxu0 0.0
  %7219 = vmatprep.subr.mxu0 0.0
  %7220 = vmatpush1.xpose.msra.mxu0 0.0
  %7221 = vmatprep.subr.mxu0 0.0
  %7222 = vmatpush1.xpose.msra.mxu0 0.0
  %7223 = vmatprep.subr.mxu0 0.0
  %7224 = vmatpush1.xpose.msra.mxu0 0.0
  %7225 = vmatprep.subr.mxu0 0.0
  %7226 = vmatpush1.xpose.msra.mxu0 0.0
  %7227 = vmatprep.subr.mxu0 0.0
  %7228 = vmatpush1.xpose.msra.mxu0 0.0
  %7229 = vmatprep.subr.mxu0 0.0
  %7230 = vmatpush1.xpose.msra.mxu0 0.0
  %7231 = vmatprep.subr.mxu0 0.0
  %7232 = vmatpush1.xpose.msra.mxu0 0.0
  %7233 = vmatprep.subr.mxu0 0.0
  %7234 = vmatpush1.xpose.msra.mxu0 0.0
  %7235 = vmatprep.subr.mxu0 0.0
  %7236 = vmatpush1.xpose.msra.mxu0 0.0
  %7237 = vmatprep.subr.mxu0 0.0
  %7238 = vmatpush1.xpose.msra.mxu0 0.0
  %7239 = vmatprep.subr.mxu0 0.0
  %7240 = vmatpush1.xpose.msra.mxu0 0.0
  %7241 = vmatprep.subr.mxu0 0.0
  %7242 = vmatpush1.xpose.msra.mxu0 0.0
  %7243 = vmatprep.subr.mxu0 0.0
  %7244 = vmatpush1.xpose.msra.mxu0 0.0
  %7245 = vmatprep.subr.mxu0 0.0
  %7246 = vmatpush1.xpose.msra.mxu0 0.0
  %7247 = vmatprep.subr.mxu0 0.0
  %7248 = vmatpush1.xpose.msra.mxu0 0.0
  %7249 = vmatprep.subr.mxu0 0.0
  %7250 = vmatpush1.xpose.msra.mxu0 0.0
  %7251 = vmatprep.subr.mxu0 0.0
  %7252 = vmatpush1.xpose.msra.mxu0 0.0
  %7253 = vmatprep.subr.mxu0 0.0
  %7254 = vmatpush1.xpose.msra.mxu0 0.0
  %7255 = vmatprep.subr.mxu0 0.0
  %7256 = vmatpush1.xpose.msra.mxu0 0.0
  %7257 = vmatprep.subr.mxu0 0.0
  %7258 = vmatpush1.xpose.msra.mxu0 0.0
  %7259 = vmatprep.subr.mxu0 0.0
  %7260 = vmatpush1.xpose.msra.mxu0 0.0
  %7261 = vmatprep.subr.mxu0 0.0
  %7262 = vmatpush1.xpose.msra.mxu0 0.0
  %7263 = vmatprep.mubr.f32.mxu0 0.0
  %7264 = vmatmul.mubr.f32.gmra.mrb[0].mxu0 %v7188
  %v7265 = vpop.f32.mrb[0].mxu0
  %v7266 = vadd.f32 0.0, %v7265
  %v7267 = vpop.f32.mrb[0].mxu0
  %7268 = vmatprep.mubr.f32.mxu0 0.0
  %7269 = vmatmul.mubr.f32.gmra.mrb[0].mxu0 %v7191
  %v7270 = vpop.f32.mrb[0].mxu0
  %v7271 = vadd.f32 0.0, %v7270
  %v7272 = vpop.f32.mrb[0].mxu0
  %7273 = vdwg.mxu0
  %v7275 = vsel %vm5533, %v1700, 0
  %v7278 = vsel %vm5533, %v1705, 0
  %v7281 = vsel %vm5533, %v3500, 0
  %v7284 = vsel %vm5533, %v3505, 0
  %7286 = vmatprep.subr.mxu0 0.0
  %7287 = vmatpush1.xpose.msra.mxu0 %v7281
  %7288 = vmatprep.subr.mxu0 0.0
  %7289 = vmatpush1.xpose.msra.mxu0 %v7284
  %7290 = vmatprep.subr.mxu0 0.0
  %7291 = vmatpush1.xpose.msra.mxu0 0.0
  %7292 = vmatprep.subr.mxu0 0.0
  %7293 = vmatpush1.xpose.msra.mxu0 0.0
  %7294 = vmatprep.subr.mxu0 0.0
  %7295 = vmatpush1.xpose.msra.mxu0 0.0
  %7296 = vmatprep.subr.mxu0 0.0
  %7297 = vmatpush1.xpose.msra.mxu0 0.0
  %7298 = vmatprep.subr.mxu0 0.0
  %7299 = vmatpush1.xpose.msra.mxu0 0.0
  %7300 = vmatprep.subr.mxu0 0.0
  %7301 = vmatpush1.xpose.msra.mxu0 0.0
  %7302 = vmatprep.subr.mxu0 0.0
  %7303 = vmatpush1.xpose.msra.mxu0 0.0
  %7304 = vmatprep.subr.mxu0 0.0
  %7305 = vmatpush1.xpose.msra.mxu0 0.0
  %7306 = vmatprep.subr.mxu0 0.0
  %7307 = vmatpush1.xpose.msra.mxu0 0.0
  %7308 = vmatprep.subr.mxu0 0.0
  %7309 = vmatpush1.xpose.msra.mxu0 0.0
  %7310 = vmatprep.subr.mxu0 0.0
  %7311 = vmatpush1.xpose.msra.mxu0 0.0
  %7312 = vmatprep.subr.mxu0 0.0
  %7313 = vmatpush1.xpose.msra.mxu0 0.0
  %7314 = vmatprep.subr.mxu0 0.0
  %7315 = vmatpush1.xpose.msra.mxu0 0.0
  %7316 = vmatprep.subr.mxu0 0.0
  %7317 = vmatpush1.xpose.msra.mxu0 0.0
  %7318 = vmatprep.subr.mxu0 0.0
  %7319 = vmatpush1.xpose.msra.mxu0 0.0
  %7320 = vmatprep.subr.mxu0 0.0
  %7321 = vmatpush1.xpose.msra.mxu0 0.0
  %7322 = vmatprep.subr.mxu0 0.0
  %7323 = vmatpush1.xpose.msra.mxu0 0.0
  %7324 = vmatprep.subr.mxu0 0.0
  %7325 = vmatpush1.xpose.msra.mxu0 0.0
  %7326 = vmatprep.subr.mxu0 0.0
  %7327 = vmatpush1.xpose.msra.mxu0 0.0
  %7328 = vmatprep.subr.mxu0 0.0
  %7329 = vmatpush1.xpose.msra.mxu0 0.0
  %7330 = vmatprep.subr.mxu0 0.0
  %7331 = vmatpush1.xpose.msra.mxu0 0.0
  %7332 = vmatprep.subr.mxu0 0.0
  %7333 = vmatpush1.xpose.msra.mxu0 0.0
  %7334 = vmatprep.subr.mxu0 0.0
  %7335 = vmatpush1.xpose.msra.mxu0 0.0
  %7336 = vmatprep.subr.mxu0 0.0
  %7337 = vmatpush1.xpose.msra.mxu0 0.0
  %7338 = vmatprep.subr.mxu0 0.0
  %7339 = vmatpush1.xpose.msra.mxu0 0.0
  %7340 = vmatprep.subr.mxu0 0.0
  %7341 = vmatpush1.xpose.msra.mxu0 0.0
  %7342 = vmatprep.subr.mxu0 0.0
  %7343 = vmatpush1.xpose.msra.mxu0 0.0
  %7344 = vmatprep.subr.mxu0 0.0
  %7345 = vmatpush1.xpose.msra.mxu0 0.0
  %7346 = vmatprep.subr.mxu0 0.0
  %7347 = vmatpush1.xpose.msra.mxu0 0.0
  %7348 = vmatprep.subr.mxu0 0.0
  %7349 = vmatpush1.xpose.msra.mxu0 0.0
  %7350 = vmatprep.mubr.f32.mxu0 0.0
  %7351 = vmatmul.mubr.f32.gmra.mrb[0].mxu0 %v7275
  %v7352 = vpop.f32.mrb[0].mxu0
  %v7353 = vadd.f32 0.0, %v7352
  %v7354 = vpop.f32.mrb[0].mxu0
  %7355 = vmatprep.mubr.f32.mxu0 0.0
  %7356 = vmatmul.mubr.f32.gmra.mrb[0].mxu0 %v7278
  %v7357 = vpop.f32.mrb[0].mxu0
  %v7358 = vadd.f32 0.0, %v7357
  %v7359 = vpop.f32.mrb[0].mxu0
  %7360 = vdwg.mxu0
  %v7362 = vsel %vm5533, %v1775, 0
  %v7365 = vsel %vm5533, %v1780, 0
  %v7368 = vsel %vm5533, %v3575, 0
  %v7371 = vsel %vm5533, %v3580, 0
  %7373 = vmatprep.subr.mxu0 0.0
  %7374 = vmatpush1.xpose.msra.mxu0 %v7368
  %7375 = vmatprep.subr.mxu0 0.0
  %7376 = vmatpush1.xpose.msra.mxu0 %v7371
  %7377 = vmatprep.subr.mxu0 0.0
  %7378 = vmatpush1.xpose.msra.mxu0 0.0
  %7379 = vmatprep.subr.mxu0 0.0
  %7380 = vmatpush1.xpose.msra.mxu0 0.0
  %7381 = vmatprep.subr.mxu0 0.0
  %7382 = vmatpush1.xpose.msra.mxu0 0.0
  %7383 = vmatprep.subr.mxu0 0.0
  %7384 = vmatpush1.xpose.msra.mxu0 0.0
  %7385 = vmatprep.subr.mxu0 0.0
  %7386 = vmatpush1.xpose.msra.mxu0 0.0
  %7387 = vmatprep.subr.mxu0 0.0
  %7388 = vmatpush1.xpose.msra.mxu0 0.0
  %7389 = vmatprep.subr.mxu0 0.0
  %7390 = vmatpush1.xpose.msra.mxu0 0.0
  %7391 = vmatprep.subr.mxu0 0.0
  %7392 = vmatpush1.xpose.msra.mxu0 0.0
  %7393 = vmatprep.subr.mxu0 0.0
  %7394 = vmatpush1.xpose.msra.mxu0 0.0
  %7395 = vmatprep.subr.mxu0 0.0
  %7396 = vmatpush1.xpose.msra.mxu0 0.0
  %7397 = vmatprep.subr.mxu0 0.0
  %7398 = vmatpush1.xpose.msra.mxu0 0.0
  %7399 = vmatprep.subr.mxu0 0.0
  %7400 = vmatpush1.xpose.msra.mxu0 0.0
  %7401 = vmatprep.subr.mxu0 0.0
  %7402 = vmatpush1.xpose.msra.mxu0 0.0
  %7403 = vmatprep.subr.mxu0 0.0
  %7404 = vmatpush1.xpose.msra.mxu0 0.0
  %7405 = vmatprep.subr.mxu0 0.0
  %7406 = vmatpush1.xpose.msra.mxu0 0.0
  %7407 = vmatprep.subr.mxu0 0.0
  %7408 = vmatpush1.xpose.msra.mxu0 0.0
  %7409 = vmatprep.subr.mxu0 0.0
  %7410 = vmatpush1.xpose.msra.mxu0 0.0
  %7411 = vmatprep.subr.mxu0 0.0
  %7412 = vmatpush1.xpose.msra.mxu0 0.0
  %7413 = vmatprep.subr.mxu0 0.0
  %7414 = vmatpush1.xpose.msra.mxu0 0.0
  %7415 = vmatprep.subr.mxu0 0.0
  %7416 = vmatpush1.xpose.msra.mxu0 0.0
  %7417 = vmatprep.subr.mxu0 0.0
  %7418 = vmatpush1.xpose.msra.mxu0 0.0
  %7419 = vmatprep.subr.mxu0 0.0
  %7420 = vmatpush1.xpose.msra.mxu0 0.0
  %7421 = vmatprep.subr.mxu0 0.0
  %7422 = vmatpush1.xpose.msra.mxu0 0.0
  %7423 = vmatprep.subr.mxu0 0.0
  %7424 = vmatpush1.xpose.msra.mxu0 0.0
  %7425 = vmatprep.subr.mxu0 0.0
  %7426 = vmatpush1.xpose.msra.mxu0 0.0
  %7427 = vmatprep.subr.mxu0 0.0
  %7428 = vmatpush1.xpose.msra.mxu0 0.0
  %7429 = vmatprep.subr.mxu0 0.0
  %7430 = vmatpush1.xpose.msra.mxu0 0.0
  %7431 = vmatprep.subr.mxu0 0.0
  %7432 = vmatpush1.xpose.msra.mxu0 0.0
  %7433 = vmatprep.subr.mxu0 0.0
  %7434 = vmatpush1.xpose.msra.mxu0 0.0
  %7435 = vmatprep.subr.mxu0 0.0
  %7436 = vmatpush1.xpose.msra.mxu0 0.0
  %7437 = vmatprep.mubr.f32.mxu0 0.0
  %7438 = vmatmul.mubr.f32.gmra.mrb[0].mxu0 %v7362
  %v7439 = vpop.f32.mrb[0].mxu0
  %v7440 = vadd.f32 0.0, %v7439
  %v7441 = vpop.f32.mrb[0].mxu0
  %7442 = vmatprep.mubr.f32.mxu0 0.0
  %7443 = vmatmul.mubr.f32.gmra.mrb[0].mxu0 %v7365
  %v7444 = vpop.f32.mrb[0].mxu0
  %v7445 = vadd.f32 0.0, %v7444
  %v7446 = vpop.f32.mrb[0].mxu0
  %7447 = vdwg.mxu0
  %v7449 = vsel %vm5533, %v1850, 0
  %v7452 = vsel %vm5533, %v1855, 0
  %v7455 = vsel %vm5533, %v3650, 0
  %v7458 = vsel %vm5533, %v3655, 0
  %7460 = vmatprep.subr.mxu0 0.0
  %7461 = vmatpush1.xpose.msra.mxu0 %v7455
  %7462 = vmatprep.subr.mxu0 0.0
  %7463 = vmatpush1.xpose.msra.mxu0 %v7458
  %7464 = vmatprep.subr.mxu0 0.0
  %7465 = vmatpush1.xpose.msra.mxu0 0.0
  %7466 = vmatprep.subr.mxu0 0.0
  %7467 = vmatpush1.xpose.msra.mxu0 0.0
  %7468 = vmatprep.subr.mxu0 0.0
  %7469 = vmatpush1.xpose.msra.mxu0 0.0
  %7470 = vmatprep.subr.mxu0 0.0
  %7471 = vmatpush1.xpose.msra.mxu0 0.0
  %7472 = vmatprep.subr.mxu0 0.0
  %7473 = vmatpush1.xpose.msra.mxu0 0.0
  %7474 = vmatprep.subr.mxu0 0.0
  %7475 = vmatpush1.xpose.msra.mxu0 0.0
  %7476 = vmatprep.subr.mxu0 0.0
  %7477 = vmatpush1.xpose.msra.mxu0 0.0
  %7478 = vmatprep.subr.mxu0 0.0
  %7479 = vmatpush1.xpose.msra.mxu0 0.0
  %7480 = vmatprep.subr.mxu0 0.0
  %7481 = vmatpush1.xpose.msra.mxu0 0.0
  %7482 = vmatprep.subr.mxu0 0.0
  %7483 = vmatpush1.xpose.msra.mxu0 0.0
  %7484 = vmatprep.subr.mxu0 0.0
  %7485 = vmatpush1.xpose.msra.mxu0 0.0
  %7486 = vmatprep.subr.mxu0 0.0
  %7487 = vmatpush1.xpose.msra.mxu0 0.0
  %7488 = vmatprep.subr.mxu0 0.0
  %7489 = vmatpush1.xpose.msra.mxu0 0.0
  %7490 = vmatprep.subr.mxu0 0.0
  %7491 = vmatpush1.xpose.msra.mxu0 0.0
  %7492 = vmatprep.subr.mxu0 0.0
  %7493 = vmatpush1.xpose.msra.mxu0 0.0
  %7494 = vmatprep.subr.mxu0 0.0
  %7495 = vmatpush1.xpose.msra.mxu0 0.0
  %7496 = vmatprep.subr.mxu0 0.0
  %7497 = vmatpush1.xpose.msra.mxu0 0.0
  %7498 = vmatprep.subr.mxu0 0.0
  %7499 = vmatpush1.xpose.msra.mxu0 0.0
  %7500 = vmatprep.subr.mxu0 0.0
  %7501 = vmatpush1.xpose.msra.mxu0 0.0
  %7502 = vmatprep.subr.mxu0 0.0
  %7503 = vmatpush1.xpose.msra.mxu0 0.0
  %7504 = vmatprep.subr.mxu0 0.0
  %7505 = vmatpush1.xpose.msra.mxu0 0.0
  %7506 = vmatprep.subr.mxu0 0.0
  %7507 = vmatpush1.xpose.msra.mxu0 0.0
  %7508 = vmatprep.subr.mxu0 0.0
  %7509 = vmatpush1.xpose.msra.mxu0 0.0
  %7510 = vmatprep.subr.mxu0 0.0
  %7511 = vmatpush1.xpose.msra.mxu0 0.0
  %7512 = vmatprep.subr.mxu0 0.0
  %7513 = vmatpush1.xpose.msra.mxu0 0.0
  %7514 = vmatprep.subr.mxu0 0.0
  %7515 = vmatpush1.xpose.msra.mxu0 0.0
  %7516 = vmatprep.subr.mxu0 0.0
  %7517 = vmatpush1.xpose.msra.mxu0 0.0
  %7518 = vmatprep.subr.mxu0 0.0
  %7519 = vmatpush1.xpose.msra.mxu0 0.0
  %7520 = vmatprep.subr.mxu0 0.0
  %7521 = vmatpush1.xpose.msra.mxu0 0.0
  %7522 = vmatprep.subr.mxu0 0.0
  %7523 = vmatpush1.xpose.msra.mxu0 0.0
  %7524 = vmatprep.mubr.f32.mxu0 0.0
  %7525 = vmatmul.mubr.f32.gmra.mrb[0].mxu0 %v7449
  %v7526 = vpop.f32.mrb[0].mxu0
  %v7527 = vadd.f32 0.0, %v7526
  %v7528 = vpop.f32.mrb[0].mxu0
  %7529 = vmatprep.mubr.f32.mxu0 0.0
  %7530 = vmatmul.mubr.f32.gmra.mrb[0].mxu0 %v7452
  %v7531 = vpop.f32.mrb[0].mxu0
  %v7532 = vadd.f32 0.0, %v7531
  %v7533 = vpop.f32.mrb[0].mxu0
  %7534 = vdwg.mxu0
  %v7536 = vsel %vm5533, %v1925, 0
  %v7539 = vsel %vm5533, %v1930, 0
  %v7542 = vsel %vm5533, %v3725, 0
  %v7545 = vsel %vm5533, %v3730, 0
  %7547 = vmatprep.subr.mxu0 0.0
  %7548 = vmatpush1.xpose.msra.mxu0 %v7542
  %7549 = vmatprep.subr.mxu0 0.0
  %7550 = vmatpush1.xpose.msra.mxu0 %v7545
  %7551 = vmatprep.subr.mxu0 0.0
  %7552 = vmatpush1.xpose.msra.mxu0 0.0
  %7553 = vmatprep.subr.mxu0 0.0
  %7554 = vmatpush1.xpose.msra.mxu0 0.0
  %7555 = vmatprep.subr.mxu0 0.0
  %7556 = vmatpush1.xpose.msra.mxu0 0.0
  %7557 = vmatprep.subr.mxu0 0.0
  %7558 = vmatpush1.xpose.msra.mxu0 0.0
  %7559 = vmatprep.subr.mxu0 0.0
  %7560 = vmatpush1.xpose.msra.mxu0 0.0
  %7561 = vmatprep.subr.mxu0 0.0
  %7562 = vmatpush1.xpose.msra.mxu0 0.0
  %7563 = vmatprep.subr.mxu0 0.0
  %7564 = vmatpush1.xpose.msra.mxu0 0.0
  %7565 = vmatprep.subr.mxu0 0.0
  %7566 = vmatpush1.xpose.msra.mxu0 0.0
  %7567 = vmatprep.subr.mxu0 0.0
  %7568 = vmatpush1.xpose.msra.mxu0 0.0
  %7569 = vmatprep.subr.mxu0 0.0
  %7570 = vmatpush1.xpose.msra.mxu0 0.0
  %7571 = vmatprep.subr.mxu0 0.0
  %7572 = vmatpush1.xpose.msra.mxu0 0.0
  %7573 = vmatprep.subr.mxu0 0.0
  %7574 = vmatpush1.xpose.msra.mxu0 0.0
  %7575 = vmatprep.subr.mxu0 0.0
  %7576 = vmatpush1.xpose.msra.mxu0 0.0
  %7577 = vmatprep.subr.mxu0 0.0
  %7578 = vmatpush1.xpose.msra.mxu0 0.0
  %7579 = vmatprep.subr.mxu0 0.0
  %7580 = vmatpush1.xpose.msra.mxu0 0.0
  %7581 = vmatprep.subr.mxu0 0.0
  %7582 = vmatpush1.xpose.msra.mxu0 0.0
  %7583 = vmatprep.subr.mxu0 0.0
  %7584 = vmatpush1.xpose.msra.mxu0 0.0
  %7585 = vmatprep.subr.mxu0 0.0
  %7586 = vmatpush1.xpose.msra.mxu0 0.0
  %7587 = vmatprep.subr.mxu0 0.0
  %7588 = vmatpush1.xpose.msra.mxu0 0.0
  %7589 = vmatprep.subr.mxu0 0.0
  %7590 = vmatpush1.xpose.msra.mxu0 0.0
  %7591 = vmatprep.subr.mxu0 0.0
  %7592 = vmatpush1.xpose.msra.mxu0 0.0
  %7593 = vmatprep.subr.mxu0 0.0
  %7594 = vmatpush1.xpose.msra.mxu0 0.0
  %7595 = vmatprep.subr.mxu0 0.0
  %7596 = vmatpush1.xpose.msra.mxu0 0.0
  %7597 = vmatprep.subr.mxu0 0.0
  %7598 = vmatpush1.xpose.msra.mxu0 0.0
  %7599 = vmatprep.subr.mxu0 0.0
  %7600 = vmatpush1.xpose.msra.mxu0 0.0
  %7601 = vmatprep.subr.mxu0 0.0
  %7602 = vmatpush1.xpose.msra.mxu0 0.0
  %7603 = vmatprep.subr.mxu0 0.0
  %7604 = vmatpush1.xpose.msra.mxu0 0.0
  %7605 = vmatprep.subr.mxu0 0.0
  %7606 = vmatpush1.xpose.msra.mxu0 0.0
  %7607 = vmatprep.subr.mxu0 0.0
  %7608 = vmatpush1.xpose.msra.mxu0 0.0
  %7609 = vmatprep.subr.mxu0 0.0
  %7610 = vmatpush1.xpose.msra.mxu0 0.0
  %7611 = vmatprep.mubr.f32.mxu0 0.0
  %7612 = vmatmul.mubr.f32.gmra.mrb[0].mxu0 %v7536
  %v7613 = vpop.f32.mrb[0].mxu0
  %v7614 = vadd.f32 0.0, %v7613
  %v7615 = vpop.f32.mrb[0].mxu0
  %7616 = vmatprep.mubr.f32.mxu0 0.0
  %7617 = vmatmul.mubr.f32.gmra.mrb[0].mxu0 %v7539
  %v7618 = vpop.f32.mrb[0].mxu0
  %v7619 = vadd.f32 0.0, %v7618
  %v7620 = vpop.f32.mrb[0].mxu0
  %7621 = vdwg.mxu0
  %vm7622 = vcmask 97280
  %v7623 = vsel %vm7622, %v5613, -inf
  %7624 = vmax.xlane.f32.xlu0 %v7623
  %v7625 = vpop.xlane.xlu0 %7624
  %vm7626 = vcmask 93184
  %v7627 = vsel %vm7626, %v5618, -inf
  %7628 = vmax.xlane.f32.xlu0 %v7627
  %v7629 = vpop.xlane.xlu0 %7628
  %v7630 = vsel %vm7622, %v5700, -inf
  %7631 = vmax.xlane.f32.xlu0 %v7630
  %v7632 = vpop.xlane.xlu0 %7631
  %v7633 = vsel %vm7626, %v5705, -inf
  %7634 = vmax.xlane.f32.xlu0 %v7633
  %v7635 = vpop.xlane.xlu0 %7634
  %v7636 = vsel %vm7622, %v5787, -inf
  %7637 = vmax.xlane.f32.xlu0 %v7636
  %v7638 = vpop.xlane.xlu0 %7637
  %v7639 = vsel %vm7626, %v5792, -inf
  %7640 = vmax.xlane.f32.xlu0 %v7639
  %v7641 = vpop.xlane.xlu0 %7640
  %v7642 = vsel %vm7622, %v5874, -inf
  %7643 = vmax.xlane.f32.xlu0 %v7642
  %v7644 = vpop.xlane.xlu0 %7643
  %v7645 = vsel %vm7626, %v5879, -inf
  %7646 = vmax.xlane.f32.xlu0 %v7645
  %v7647 = vpop.xlane.xlu0 %7646
  %v7648 = vsel %vm7622, %v5961, -inf
  %7649 = vmax.xlane.f32.xlu0 %v7648
  %v7650 = vpop.xlane.xlu0 %7649
  %v7651 = vsel %vm7626, %v5966, -inf
  %7652 = vmax.xlane.f32.xlu0 %v7651
  %v7653 = vpop.xlane.xlu0 %7652
  %v7654 = vsel %vm7622, %v6048, -inf
  %7655 = vmax.xlane.f32.xlu0 %v7654
  %v7656 = vpop.xlane.xlu0 %7655
  %v7657 = vsel %vm7626, %v6053, -inf
  %7658 = vmax.xlane.f32.xlu0 %v7657
  %v7659 = vpop.xlane.xlu0 %7658
  %v7660 = vsel %vm7622, %v6135, -inf
  %7661 = vmax.xlane.f32.xlu0 %v7660
  %v7662 = vpop.xlane.xlu0 %7661
  %v7663 = vsel %vm7626, %v6140, -inf
  %7664 = vmax.xlane.f32.xlu0 %v7663
  %v7665 = vpop.xlane.xlu0 %7664
  %v7666 = vsel %vm7622, %v6222, -inf
  %7667 = vmax.xlane.f32.xlu0 %v7666
  %v7668 = vpop.xlane.xlu0 %7667
  %v7669 = vsel %vm7626, %v6227, -inf
  %7670 = vmax.xlane.f32.xlu0 %v7669
  %v7671 = vpop.xlane.xlu0 %7670
  %v7672 = vsel %vm7622, %v6309, -inf
  %7673 = vmax.xlane.f32.xlu0 %v7672
  %v7674 = vpop.xlane.xlu0 %7673
  %v7675 = vsel %vm7626, %v6314, -inf
  %7676 = vmax.xlane.f32.xlu0 %v7675
  %v7677 = vpop.xlane.xlu0 %7676
  %v7678 = vsel %vm7622, %v6396, -inf
  %7679 = vmax.xlane.f32.xlu0 %v7678
  %v7680 = vpop.xlane.xlu0 %7679
  %v7681 = vsel %vm7626, %v6401, -inf
  %7682 = vmax.xlane.f32.xlu0 %v7681
  %v7683 = vpop.xlane.xlu0 %7682
  %v7684 = vsel %vm7622, %v6483, -inf
  %7685 = vmax.xlane.f32.xlu0 %v7684
  %v7686 = vpop.xlane.xlu0 %7685
  %v7687 = vsel %vm7626, %v6488, -inf
  %7688 = vmax.xlane.f32.xlu0 %v7687
  %v7689 = vpop.xlane.xlu0 %7688
  %v7690 = vsel %vm7622, %v6570, -inf
  %7691 = vmax.xlane.f32.xlu0 %v7690
  %v7692 = vpop.xlane.xlu0 %7691
  %v7693 = vsel %vm7626, %v6575, -inf
  %7694 = vmax.xlane.f32.xlu0 %v7693
  %v7695 = vpop.xlane.xlu0 %7694
  %v7696 = vsel %vm7622, %v6657, -inf
  %7697 = vmax.xlane.f32.xlu0 %v7696
  %v7698 = vpop.xlane.xlu0 %7697
  %v7699 = vsel %vm7626, %v6662, -inf
  %7700 = vmax.xlane.f32.xlu0 %v7699
  %v7701 = vpop.xlane.xlu0 %7700
  %v7702 = vsel %vm7622, %v6744, -inf
  %7703 = vmax.xlane.f32.xlu0 %v7702
  %v7704 = vpop.xlane.xlu0 %7703
  %v7705 = vsel %vm7626, %v6749, -inf
  %7706 = vmax.xlane.f32.xlu0 %v7705
  %v7707 = vpop.xlane.xlu0 %7706
  %v7708 = vsel %vm7622, %v6831, -inf
  %7709 = vmax.xlane.f32.xlu0 %v7708
  %v7710 = vpop.xlane.xlu0 %7709
  %v7711 = vsel %vm7626, %v6836, -inf
  %7712 = vmax.xlane.f32.xlu0 %v7711
  %v7713 = vpop.xlane.xlu0 %7712
  %v7714 = vsel %vm7622, %v6918, -inf
  %7715 = vmax.xlane.f32.xlu0 %v7714
  %v7716 = vpop.xlane.xlu0 %7715
  %v7717 = vsel %vm7626, %v6923, -inf
  %7718 = vmax.xlane.f32.xlu0 %v7717
  %v7719 = vpop.xlane.xlu0 %7718
  %v7720 = vsel %vm7622, %v7005, -inf
  %7721 = vmax.xlane.f32.xlu0 %v7720
  %v7722 = vpop.xlane.xlu0 %7721
  %v7723 = vsel %vm7626, %v7010, -inf
  %7724 = vmax.xlane.f32.xlu0 %v7723
  %v7725 = vpop.xlane.xlu0 %7724
  %v7726 = vsel %vm7622, %v7092, -inf
  %7727 = vmax.xlane.f32.xlu0 %v7726
  %v7728 = vpop.xlane.xlu0 %7727
  %v7729 = vsel %vm7626, %v7097, -inf
  %7730 = vmax.xlane.f32.xlu0 %v7729
  %v7731 = vpop.xlane.xlu0 %7730
  %v7732 = vsel %vm7622, %v7179, -inf
  %7733 = vmax.xlane.f32.xlu0 %v7732
  %v7734 = vpop.xlane.xlu0 %7733
  %v7735 = vsel %vm7626, %v7184, -inf
  %7736 = vmax.xlane.f32.xlu0 %v7735
  %v7737 = vpop.xlane.xlu0 %7736
  %v7738 = vsel %vm7622, %v7266, -inf
  %7739 = vmax.xlane.f32.xlu0 %v7738
  %v7740 = vpop.xlane.xlu0 %7739
  %v7741 = vsel %vm7626, %v7271, -inf
  %7742 = vmax.xlane.f32.xlu0 %v7741
  %v7743 = vpop.xlane.xlu0 %7742
  %v7744 = vsel %vm7622, %v7353, -inf
  %7745 = vmax.xlane.f32.xlu0 %v7744
  %v7746 = vpop.xlane.xlu0 %7745
  %v7747 = vsel %vm7626, %v7358, -inf
  %7748 = vmax.xlane.f32.xlu0 %v7747
  %v7749 = vpop.xlane.xlu0 %7748
  %v7750 = vsel %vm7622, %v7440, -inf
  %7751 = vmax.xlane.f32.xlu0 %v7750
  %v7752 = vpop.xlane.xlu0 %7751
  %v7753 = vsel %vm7626, %v7445, -inf
  %7754 = vmax.xlane.f32.xlu0 %v7753
  %v7755 = vpop.xlane.xlu0 %7754
  %v7756 = vsel %vm7622, %v7527, -inf
  %7757 = vmax.xlane.f32.xlu0 %v7756
  %v7758 = vpop.xlane.xlu0 %7757
  %v7759 = vsel %vm7626, %v7532, -inf
  %7760 = vmax.xlane.f32.xlu0 %v7759
  %v7761 = vpop.xlane.xlu0 %7760
  %v7762 = vsel %vm7622, %v7614, -inf
  %7763 = vmax.xlane.f32.xlu0 %v7762
  %v7764 = vpop.xlane.xlu0 %7763
  %v7765 = vsel %vm7626, %v7619, -inf
  %7766 = vmax.xlane.f32.xlu0 %v7765
  %v7767 = vpop.xlane.xlu0 %7766
  %v7768 = vsub.f32 %v5613, %v7625
  %v7769 = vsub.f32 %v5618, %v7629
  %v7770 = vsub.f32 %v5700, %v7632
  %v7771 = vsub.f32 %v5705, %v7635
  %v7772 = vsub.f32 %v5787, %v7638
  %v7773 = vsub.f32 %v5792, %v7641
  %v7774 = vsub.f32 %v5874, %v7644
  %v7775 = vsub.f32 %v5879, %v7647
  %v7776 = vsub.f32 %v5961, %v7650
  %v7777 = vsub.f32 %v5966, %v7653
  %v7778 = vsub.f32 %v6048, %v7656
  %v7779 = vsub.f32 %v6053, %v7659
  %v7780 = vsub.f32 %v6135, %v7662
  %v7781 = vsub.f32 %v6140, %v7665
  %v7782 = vsub.f32 %v6222, %v7668
  %v7783 = vsub.f32 %v6227, %v7671
  %v7784 = vsub.f32 %v6309, %v7674
  %v7785 = vsub.f32 %v6314, %v7677
  %v7786 = vsub.f32 %v6396, %v7680
  %v7787 = vsub.f32 %v6401, %v7683
  %v7788 = vsub.f32 %v6483, %v7686
  %v7789 = vsub.f32 %v6488, %v7689
  %v7790 = vsub.f32 %v6570, %v7692
  %v7791 = vsub.f32 %v6575, %v7695
  %v7792 = vsub.f32 %v6657, %v7698
  %v7793 = vsub.f32 %v6662, %v7701
  %v7794 = vsub.f32 %v6744, %v7704
  %v7795 = vsub.f32 %v6749, %v7707
  %v7796 = vsub.f32 %v6831, %v7710
  %v7797 = vsub.f32 %v6836, %v7713
  %v7798 = vsub.f32 %v6918, %v7716
  %v7799 = vsub.f32 %v6923, %v7719
  %v7800 = vsub.f32 %v7005, %v7722
  %v7801 = vsub.f32 %v7010, %v7725
  %v7802 = vsub.f32 %v7092, %v7728
  %v7803 = vsub.f32 %v7097, %v7731
  %v7804 = vsub.f32 %v7179, %v7734
  %v7805 = vsub.f32 %v7184, %v7737
  %v7806 = vsub.f32 %v7266, %v7740
  %v7807 = vsub.f32 %v7271, %v7743
  %v7808 = vsub.f32 %v7353, %v7746
  %v7809 = vsub.f32 %v7358, %v7749
  %v7810 = vsub.f32 %v7440, %v7752
  %v7811 = vsub.f32 %v7445, %v7755
  %v7812 = vsub.f32 %v7527, %v7758
  %v7813 = vsub.f32 %v7532, %v7761
  %v7814 = vsub.f32 %v7614, %v7764
  %v7815 = vsub.f32 %v7619, %v7767
  %v7816 = vmul.f32 %v7768, 1.442695
  %v7817 = vpow.pop %v7816
  %v7818 = vmul.f32 %v7769, 1.442695
  %v7819 = vpow.pop %v7818
  %v7820 = vmul.f32 %v7770, 1.442695
  %v7821 = vpow.pop %v7820
  %v7822 = vmul.f32 %v7771, 1.442695
  %v7823 = vpow.pop %v7822
  %v7824 = vmul.f32 %v7772, 1.442695
  %v7825 = vpow.pop %v7824
  %v7826 = vmul.f32 %v7773, 1.442695
  %v7827 = vpow.pop %v7826
  %v7828 = vmul.f32 %v7774, 1.442695
  %v7829 = vpow.pop %v7828
  %v7830 = vmul.f32 %v7775, 1.442695
  %v7831 = vpow.pop %v7830
  %v7832 = vmul.f32 %v7776, 1.442695
  %v7833 = vpow.pop %v7832
  %v7834 = vmul.f32 %v7777, 1.442695
  %v7835 = vpow.pop %v7834
  %v7836 = vmul.f32 %v7778, 1.442695
  %v7837 = vpow.pop %v7836
  %v7838 = vmul.f32 %v7779, 1.442695
  %v7839 = vpow.pop %v7838
  %v7840 = vmul.f32 %v7780, 1.442695
  %v7841 = vpow.pop %v7840
  %v7842 = vmul.f32 %v7781, 1.442695
  %v7843 = vpow.pop %v7842
  %v7844 = vmul.f32 %v7782, 1.442695
  %v7845 = vpow.pop %v7844
  %v7846 = vmul.f32 %v7783, 1.442695
  %v7847 = vpow.pop %v7846
  %v7848 = vmul.f32 %v7784, 1.442695
  %v7849 = vpow.pop %v7848
  %v7850 = vmul.f32 %v7785, 1.442695
  %v7851 = vpow.pop %v7850
  %v7852 = vmul.f32 %v7786, 1.442695
  %v7853 = vpow.pop %v7852
  %v7854 = vmul.f32 %v7787, 1.442695
  %v7855 = vpow.pop %v7854
  %v7856 = vmul.f32 %v7788, 1.442695
  %v7857 = vpow.pop %v7856
  %v7858 = vmul.f32 %v7789, 1.442695
  %v7859 = vpow.pop %v7858
  %v7860 = vmul.f32 %v7790, 1.442695
  %v7861 = vpow.pop %v7860
  %v7862 = vmul.f32 %v7791, 1.442695
  %v7863 = vpow.pop %v7862
  %v7864 = vmul.f32 %v7792, 1.442695
  %v7865 = vpow.pop %v7864
  %v7866 = vmul.f32 %v7793, 1.442695
  %v7867 = vpow.pop %v7866
  %v7868 = vmul.f32 %v7794, 1.442695
  %v7869 = vpow.pop %v7868
  %v7870 = vmul.f32 %v7795, 1.442695
  %v7871 = vpow.pop %v7870
  %v7872 = vmul.f32 %v7796, 1.442695
  %v7873 = vpow.pop %v7872
  %v7874 = vmul.f32 %v7797, 1.442695
  %v7875 = vpow.pop %v7874
  %v7876 = vmul.f32 %v7798, 1.442695
  %v7877 = vpow.pop %v7876
  %v7878 = vmul.f32 %v7799, 1.442695
  %v7879 = vpow.pop %v7878
  %v7880 = vmul.f32 %v7800, 1.442695
  %v7881 = vpow.pop %v7880
  %v7882 = vmul.f32 %v7801, 1.442695
  %v7883 = vpow.pop %v7882
  %v7884 = vmul.f32 %v7802, 1.442695
  %v7885 = vpow.pop %v7884
  %v7886 = vmul.f32 %v7803, 1.442695
  %v7887 = vpow.pop %v7886
  %v7888 = vmul.f32 %v7804, 1.442695
  %v7889 = vpow.pop %v7888
  %v7890 = vmul.f32 %v7805, 1.442695
  %v7891 = vpow.pop %v7890
  %v7892 = vmul.f32 %v7806, 1.442695
  %v7893 = vpow.pop %v7892
  %v7894 = vmul.f32 %v7807, 1.442695
  %v7895 = vpow.pop %v7894
  %v7896 = vmul.f32 %v7808, 1.442695
  %v7897 = vpow.pop %v7896
  %v7898 = vmul.f32 %v7809, 1.442695
  %v7899 = vpow.pop %v7898
  %v7900 = vmul.f32 %v7810, 1.442695
  %v7901 = vpow.pop %v7900
  %v7902 = vmul.f32 %v7811, 1.442695
  %v7903 = vpow.pop %v7902
  %v7904 = vmul.f32 %v7812, 1.442695
  %v7905 = vpow.pop %v7904
  %v7906 = vmul.f32 %v7813, 1.442695
  %v7907 = vpow.pop %v7906
  %v7908 = vmul.f32 %v7814, 1.442695
  %v7909 = vpow.pop %v7908
  %v7910 = vmul.f32 %v7815, 1.442695
  %v7911 = vpow.pop %v7910
  %v7912 = vsel %vm7622, %v7817, 0.0
  %7913 = vadd.xlane.f32.xlu0 %v7912
  %v7914 = vpop.xlane.xlu0 %7913
  %v7915 = vsel %vm7626, %v7819, 0.0
  %7916 = vadd.xlane.f32.xlu0 %v7915
  %v7917 = vpop.xlane.xlu0 %7916
  %v7918 = vsel %vm7622, %v7821, 0.0
  %7919 = vadd.xlane.f32.xlu0 %v7918
  %v7920 = vpop.xlane.xlu0 %7919
  %v7921 = vsel %vm7626, %v7823, 0.0
  %7922 = vadd.xlane.f32.xlu0 %v7921
  %v7923 = vpop.xlane.xlu0 %7922
  %v7924 = vsel %vm7622, %v7825, 0.0
  %7925 = vadd.xlane.f32.xlu0 %v7924
  %v7926 = vpop.xlane.xlu0 %7925
  %v7927 = vsel %vm7626, %v7827, 0.0
  %7928 = vadd.xlane.f32.xlu0 %v7927
  %v7929 = vpop.xlane.xlu0 %7928
  %v7930 = vsel %vm7622, %v7829, 0.0
  %7931 = vadd.xlane.f32.xlu0 %v7930
  %v7932 = vpop.xlane.xlu0 %7931
  %v7933 = vsel %vm7626, %v7831, 0.0
  %7934 = vadd.xlane.f32.xlu0 %v7933
  %v7935 = vpop.xlane.xlu0 %7934
  %v7936 = vsel %vm7622, %v7833, 0.0
  %7937 = vadd.xlane.f32.xlu0 %v7936
  %v7938 = vpop.xlane.xlu0 %7937
  %v7939 = vsel %vm7626, %v7835, 0.0
  %7940 = vadd.xlane.f32.xlu0 %v7939
  %v7941 = vpop.xlane.xlu0 %7940
  %v7942 = vsel %vm7622, %v7837, 0.0
  %7943 = vadd.xlane.f32.xlu0 %v7942
  %v7944 = vpop.xlane.xlu0 %7943
  %v7945 = vsel %vm7626, %v7839, 0.0
  %7946 = vadd.xlane.f32.xlu0 %v7945
  %v7947 = vpop.xlane.xlu0 %7946
  %v7948 = vsel %vm7622, %v7841, 0.0
  %7949 = vadd.xlane.f32.xlu0 %v7948
  %v7950 = vpop.xlane.xlu0 %7949
  %v7951 = vsel %vm7626, %v7843, 0.0
  %7952 = vadd.xlane.f32.xlu0 %v7951
  %v7953 = vpop.xlane.xlu0 %7952
  %v7954 = vsel %vm7622, %v7845, 0.0
  %7955 = vadd.xlane.f32.xlu0 %v7954
  %v7956 = vpop.xlane.xlu0 %7955
  %v7957 = vsel %vm7626, %v7847, 0.0
  %7958 = vadd.xlane.f32.xlu0 %v7957
  %v7959 = vpop.xlane.xlu0 %7958
  %v7960 = vsel %vm7622, %v7849, 0.0
  %7961 = vadd.xlane.f32.xlu0 %v7960
  %v7962 = vpop.xlane.xlu0 %7961
  %v7963 = vsel %vm7626, %v7851, 0.0
  %7964 = vadd.xlane.f32.xlu0 %v7963
  %v7965 = vpop.xlane.xlu0 %7964
  %v7966 = vsel %vm7622, %v7853, 0.0
  %7967 = vadd.xlane.f32.xlu0 %v7966
  %v7968 = vpop.xlane.xlu0 %7967
  %v7969 = vsel %vm7626, %v7855, 0.0
  %7970 = vadd.xlane.f32.xlu0 %v7969
  %v7971 = vpop.xlane.xlu0 %7970
  %v7972 = vsel %vm7622, %v7857, 0.0
  %7973 = vadd.xlane.f32.xlu0 %v7972
  %v7974 = vpop.xlane.xlu0 %7973
  %v7975 = vsel %vm7626, %v7859, 0.0
  %7976 = vadd.xlane.f32.xlu0 %v7975
  %v7977 = vpop.xlane.xlu0 %7976
  %v7978 = vsel %vm7622, %v7861, 0.0
  %7979 = vadd.xlane.f32.xlu0 %v7978
  %v7980 = vpop.xlane.xlu0 %7979
  %v7981 = vsel %vm7626, %v7863, 0.0
  %7982 = vadd.xlane.f32.xlu0 %v7981
  %v7983 = vpop.xlane.xlu0 %7982
  %v7984 = vsel %vm7622, %v7865, 0.0
  %7985 = vadd.xlane.f32.xlu0 %v7984
  %v7986 = vpop.xlane.xlu0 %7985
  %v7987 = vsel %vm7626, %v7867, 0.0
  %7988 = vadd.xlane.f32.xlu0 %v7987
  %v7989 = vpop.xlane.xlu0 %7988
  %v7990 = vsel %vm7622, %v7869, 0.0
  %7991 = vadd.xlane.f32.xlu0 %v7990
  %v7992 = vpop.xlane.xlu0 %7991
  %v7993 = vsel %vm7626, %v7871, 0.0
  %7994 = vadd.xlane.f32.xlu0 %v7993
  %v7995 = vpop.xlane.xlu0 %7994
  %v7996 = vsel %vm7622, %v7873, 0.0
  %7997 = vadd.xlane.f32.xlu0 %v7996
  %v7998 = vpop.xlane.xlu0 %7997
  %v7999 = vsel %vm7626, %v7875, 0.0
  %8000 = vadd.xlane.f32.xlu0 %v7999
  %v8001 = vpop.xlane.xlu0 %8000
  %v8002 = vsel %vm7622, %v7877, 0.0
  %8003 = vadd.xlane.f32.xlu0 %v8002
  %v8004 = vpop.xlane.xlu0 %8003
  %v8005 = vsel %vm7626, %v7879, 0.0
  %8006 = vadd.xlane.f32.xlu0 %v8005
  %v8007 = vpop.xlane.xlu0 %8006
  %v8008 = vsel %vm7622, %v7881, 0.0
  %8009 = vadd.xlane.f32.xlu0 %v8008
  %v8010 = vpop.xlane.xlu0 %8009
  %v8011 = vsel %vm7626, %v7883, 0.0
  %8012 = vadd.xlane.f32.xlu0 %v8011
  %v8013 = vpop.xlane.xlu0 %8012
  %v8014 = vsel %vm7622, %v7885, 0.0
  %8015 = vadd.xlane.f32.xlu0 %v8014
  %v8016 = vpop.xlane.xlu0 %8015
  %v8017 = vsel %vm7626, %v7887, 0.0
  %8018 = vadd.xlane.f32.xlu0 %v8017
  %v8019 = vpop.xlane.xlu0 %8018
  %v8020 = vsel %vm7622, %v7889, 0.0
  %8021 = vadd.xlane.f32.xlu0 %v8020
  %v8022 = vpop.xlane.xlu0 %8021
  %v8023 = vsel %vm7626, %v7891, 0.0
  %8024 = vadd.xlane.f32.xlu0 %v8023
  %v8025 = vpop.xlane.xlu0 %8024
  %v8026 = vsel %vm7622, %v7893, 0.0
  %8027 = vadd.xlane.f32.xlu0 %v8026
  %v8028 = vpop.xlane.xlu0 %8027
  %v8029 = vsel %vm7626, %v7895, 0.0
  %8030 = vadd.xlane.f32.xlu0 %v8029
  %v8031 = vpop.xlane.xlu0 %8030
  %v8032 = vsel %vm7622, %v7897, 0.0
  %8033 = vadd.xlane.f32.xlu0 %v8032
  %v8034 = vpop.xlane.xlu0 %8033
  %v8035 = vsel %vm7626, %v7899, 0.0
  %8036 = vadd.xlane.f32.xlu0 %v8035
  %v8037 = vpop.xlane.xlu0 %8036
  %v8038 = vsel %vm7622, %v7901, 0.0
  %8039 = vadd.xlane.f32.xlu0 %v8038
  %v8040 = vpop.xlane.xlu0 %8039
  %v8041 = vsel %vm7626, %v7903, 0.0
  %8042 = vadd.xlane.f32.xlu0 %v8041
  %v8043 = vpop.xlane.xlu0 %8042
  %v8044 = vsel %vm7622, %v7905, 0.0
  %8045 = vadd.xlane.f32.xlu0 %v8044
  %v8046 = vpop.xlane.xlu0 %8045
  %v8047 = vsel %vm7626, %v7907, 0.0
  %8048 = vadd.xlane.f32.xlu0 %v8047
  %v8049 = vpop.xlane.xlu0 %8048
  %v8050 = vsel %vm7622, %v7909, 0.0
  %8051 = vadd.xlane.f32.xlu0 %v8050
  %v8052 = vpop.xlane.xlu0 %8051
  %v8053 = vsel %vm7626, %v7911, 0.0
  %8054 = vadd.xlane.f32.xlu0 %v8053
  %v8055 = vpop.xlane.xlu0 %8054
  %v8056 = vrcp.pop %v7914
  %v8057 = vrcp.pop %v7917
  %v8058 = vrcp.pop %v7920
  %v8059 = vrcp.pop %v7923
  %v8060 = vrcp.pop %v7926
  %v8061 = vrcp.pop %v7929
  %v8062 = vrcp.pop %v7932
  %v8063 = vrcp.pop %v7935
  %v8064 = vrcp.pop %v7938
  %v8065 = vrcp.pop %v7941
  %v8066 = vrcp.pop %v7944
  %v8067 = vrcp.pop %v7947
  %v8068 = vrcp.pop %v7950
  %v8069 = vrcp.pop %v7953
  %v8070 = vrcp.pop %v7956
  %v8071 = vrcp.pop %v7959
  %v8072 = vrcp.pop %v7962
  %v8073 = vrcp.pop %v7965
  %v8074 = vrcp.pop %v7968
  %v8075 = vrcp.pop %v7971
  %v8076 = vrcp.pop %v7974
  %v8077 = vrcp.pop %v7977
  %v8078 = vrcp.pop %v7980
  %v8079 = vrcp.pop %v7983
  %v8080 = vrcp.pop %v7986
  %v8081 = vrcp.pop %v7989
  %v8082 = vrcp.pop %v7992
  %v8083 = vrcp.pop %v7995
  %v8084 = vrcp.pop %v7998
  %v8085 = vrcp.pop %v8001
  %v8086 = vrcp.pop %v8004
  %v8087 = vrcp.pop %v8007
  %v8088 = vrcp.pop %v8010
  %v8089 = vrcp.pop %v8013
  %v8090 = vrcp.pop %v8016
  %v8091 = vrcp.pop %v8019
  %v8092 = vrcp.pop %v8022
  %v8093 = vrcp.pop %v8025
  %v8094 = vrcp.pop %v8028
  %v8095 = vrcp.pop %v8031
  %v8096 = vrcp.pop %v8034
  %v8097 = vrcp.pop %v8037
  %v8098 = vrcp.pop %v8040
  %v8099 = vrcp.pop %v8043
  %v8100 = vrcp.pop %v8046
  %v8101 = vrcp.pop %v8049
  %v8102 = vrcp.pop %v8052
  %v8103 = vrcp.pop %v8055
  %v8104 = vmul.f32 %v7817, %v8056
  %v8105 = vmul.f32 %v7819, %v8057
  %v8106 = vmul.f32 %v7821, %v8058
  %v8107 = vmul.f32 %v7823, %v8059
  %v8108 = vmul.f32 %v7825, %v8060
  %v8109 = vmul.f32 %v7827, %v8061
  %v8110 = vmul.f32 %v7829, %v8062
  %v8111 = vmul.f32 %v7831, %v8063
  %v8112 = vmul.f32 %v7833, %v8064
  %v8113 = vmul.f32 %v7835, %v8065
  %v8114 = vmul.f32 %v7837, %v8066
  %v8115 = vmul.f32 %v7839, %v8067
  %v8116 = vmul.f32 %v7841, %v8068
  %v8117 = vmul.f32 %v7843, %v8069
  %v8118 = vmul.f32 %v7845, %v8070
  %v8119 = vmul.f32 %v7847, %v8071
  %v8120 = vmul.f32 %v7849, %v8072
  %v8121 = vmul.f32 %v7851, %v8073
  %v8122 = vmul.f32 %v7853, %v8074
  %v8123 = vmul.f32 %v7855, %v8075
  %v8124 = vmul.f32 %v7857, %v8076
  %v8125 = vmul.f32 %v7859, %v8077
  %v8126 = vmul.f32 %v7861, %v8078
  %v8127 = vmul.f32 %v7863, %v8079
  %v8128 = vmul.f32 %v7865, %v8080
  %v8129 = vmul.f32 %v7867, %v8081
  %v8130 = vmul.f32 %v7869, %v8082
  %v8131 = vmul.f32 %v7871, %v8083
  %v8132 = vmul.f32 %v7873, %v8084
  %v8133 = vmul.f32 %v7875, %v8085
  %v8134 = vmul.f32 %v7877, %v8086
  %v8135 = vmul.f32 %v7879, %v8087
  %v8136 = vmul.f32 %v7881, %v8088
  %v8137 = vmul.f32 %v7883, %v8089
  %v8138 = vmul.f32 %v7885, %v8090
  %v8139 = vmul.f32 %v7887, %v8091
  %v8140 = vmul.f32 %v7889, %v8092
  %v8141 = vmul.f32 %v7891, %v8093
  %v8142 = vmul.f32 %v7893, %v8094
  %v8143 = vmul.f32 %v7895, %v8095
  %v8144 = vmul.f32 %v7897, %v8096
  %v8145 = vmul.f32 %v7899, %v8097
  %v8146 = vmul.f32 %v7901, %v8098
  %v8147 = vmul.f32 %v7903, %v8099
  %v8148 = vmul.f32 %v7905, %v8100
  %v8149 = vmul.f32 %v7907, %v8101
  %v8150 = vmul.f32 %v7909, %v8102
  %v8151 = vmul.f32 %v7911, %v8103
  %v8153 = vsel %vm7622, %v8104, 0
  %v8156 = vsel %vm7622, %v8105, 0
  %vm8158 = vcmask 1043456
  %v8160 = vsel %vm8158, %v3805, 0
  %8162 = vmatprep.subr.mxu0 0.0
  %8163 = vmatpush1.msra.mxu0 %v3800
  %8164 = vmatprep.subr.mxu0 0.0
  %8165 = vmatpush1.msra.mxu0 %v8160
  %8166 = vmatprep.subr.mxu0 0.0
  %8167 = vmatpush1.msra.mxu0 0.0
  %8168 = vmatprep.subr.mxu0 0.0
  %8169 = vmatpush1.msra.mxu0 0.0
  %8170 = vmatprep.subr.mxu0 0.0
  %8171 = vmatpush1.msra.mxu0 0.0
  %8172 = vmatprep.subr.mxu0 0.0
  %8173 = vmatpush1.msra.mxu0 0.0
  %8174 = vmatprep.subr.mxu0 0.0
  %8175 = vmatpush1.msra.mxu0 0.0
  %8176 = vmatprep.subr.mxu0 0.0
  %8177 = vmatpush1.msra.mxu0 0.0
  %8178 = vmatprep.subr.mxu0 0.0
  %8179 = vmatpush1.msra.mxu0 0.0
  %8180 = vmatprep.subr.mxu0 0.0
  %8181 = vmatpush1.msra.mxu0 0.0
  %8182 = vmatprep.subr.mxu0 0.0
  %8183 = vmatpush1.msra.mxu0 0.0
  %8184 = vmatprep.subr.mxu0 0.0
  %8185 = vmatpush1.msra.mxu0 0.0
  %8186 = vmatprep.subr.mxu0 0.0
  %8187 = vmatpush1.msra.mxu0 0.0
  %8188 = vmatprep.subr.mxu0 0.0
  %8189 = vmatpush1.msra.mxu0 0.0
  %8190 = vmatprep.subr.mxu0 0.0
  %8191 = vmatpush1.msra.mxu0 0.0
  %8192 = vmatprep.subr.mxu0 0.0
  %8193 = vmatpush1.msra.mxu0 0.0
  %8194 = vmatprep.subr.mxu0 0.0
  %8195 = vmatpush1.msra.mxu0 0.0
  %8196 = vmatprep.subr.mxu0 0.0
  %8197 = vmatpush1.msra.mxu0 0.0
  %8198 = vmatprep.subr.mxu0 0.0
  %8199 = vmatpush1.msra.mxu0 0.0
  %8200 = vmatprep.subr.mxu0 0.0
  %8201 = vmatpush1.msra.mxu0 0.0
  %8202 = vmatprep.subr.mxu0 0.0
  %8203 = vmatpush1.msra.mxu0 0.0
  %8204 = vmatprep.subr.mxu0 0.0
  %8205 = vmatpush1.msra.mxu0 0.0
  %8206 = vmatprep.subr.mxu0 0.0
  %8207 = vmatpush1.msra.mxu0 0.0
  %8208 = vmatprep.subr.mxu0 0.0
  %8209 = vmatpush1.msra.mxu0 0.0
  %8210 = vmatprep.subr.mxu0 0.0
  %8211 = vmatpush1.msra.mxu0 0.0
  %8212 = vmatprep.subr.mxu0 0.0
  %8213 = vmatpush1.msra.mxu0 0.0
  %8214 = vmatprep.subr.mxu0 0.0
  %8215 = vmatpush1.msra.mxu0 0.0
  %8216 = vmatprep.subr.mxu0 0.0
  %8217 = vmatpush1.msra.mxu0 0.0
  %8218 = vmatprep.subr.mxu0 0.0
  %8219 = vmatpush1.msra.mxu0 0.0
  %8220 = vmatprep.subr.mxu0 0.0
  %8221 = vmatpush1.msra.mxu0 0.0
  %8222 = vmatprep.subr.mxu0 0.0
  %8223 = vmatpush1.msra.mxu0 0.0
  %8224 = vmatprep.subr.mxu0 0.0
  %8225 = vmatpush1.msra.mxu0 0.0
  %8226 = vmatprep.mubr.f32.mxu0 0.0
  %8227 = vmatmul.mubr.f32.gmra.mrb[0].mxu0 %v8153
  %v8228 = vpop.f32.mrb[0].mxu0
  %v8229 = vadd.f32 0.0, %v8228
  %v8230 = vpop.f32.mrb[0].mxu0
  %8231 = vmatprep.mubr.f32.mxu0 0.0
  %8232 = vmatmul.mubr.f32.gmra.mrb[0].mxu0 %v8156
  %v8233 = vpop.f32.mrb[0].mxu0
  %v8234 = vadd.f32 0.0, %v8233
  %v8235 = vpop.f32.mrb[0].mxu0
  %8236 = vdwg.mxu0
  %v8238 = vsel %vm7622, %v8106, 0
  %v8241 = vsel %vm7622, %v8107, 0
  %v8244 = vsel %vm8158, %v3880, 0
  %8246 = vmatprep.subr.mxu0 0.0
  %8247 = vmatpush1.msra.mxu0 %v3875
  %8248 = vmatprep.subr.mxu0 0.0
  %8249 = vmatpush1.msra.mxu0 %v8244
  %8250 = vmatprep.subr.mxu0 0.0
  %8251 = vmatpush1.msra.mxu0 0.0
  %8252 = vmatprep.subr.mxu0 0.0
  %8253 = vmatpush1.msra.mxu0 0.0
  %8254 = vmatprep.subr.mxu0 0.0
  %8255 = vmatpush1.msra.mxu0 0.0
  %8256 = vmatprep.subr.mxu0 0.0
  %8257 = vmatpush1.msra.mxu0 0.0
  %8258 = vmatprep.subr.mxu0 0.0
  %8259 = vmatpush1.msra.mxu0 0.0
  %8260 = vmatprep.subr.mxu0 0.0
  %8261 = vmatpush1.msra.mxu0 0.0
  %8262 = vmatprep.subr.mxu0 0.0
  %8263 = vmatpush1.msra.mxu0 0.0
  %8264 = vmatprep.subr.mxu0 0.0
  %8265 = vmatpush1.msra.mxu0 0.0
  %8266 = vmatprep.subr.mxu0 0.0
  %8267 = vmatpush1.msra.mxu0 0.0
  %8268 = vmatprep.subr.mxu0 0.0
  %8269 = vmatpush1.msra.mxu0 0.0
  %8270 = vmatprep.subr.mxu0 0.0
  %8271 = vmatpush1.msra.mxu0 0.0
  %8272 = vmatprep.subr.mxu0 0.0
  %8273 = vmatpush1.msra.mxu0 0.0
  %8274 = vmatprep.subr.mxu0 0.0
  %8275 = vmatpush1.msra.mxu0 0.0
  %8276 = vmatprep.subr.mxu0 0.0
  %8277 = vmatpush1.msra.mxu0 0.0
  %8278 = vmatprep.subr.mxu0 0.0
  %8279 = vmatpush1.msra.mxu0 0.0
  %8280 = vmatprep.subr.mxu0 0.0
  %8281 = vmatpush1.msra.mxu0 0.0
  %8282 = vmatprep.subr.mxu0 0.0
  %8283 = vmatpush1.msra.mxu0 0.0
  %8284 = vmatprep.subr.mxu0 0.0
  %8285 = vmatpush1.msra.mxu0 0.0
  %8286 = vmatprep.subr.mxu0 0.0
  %8287 = vmatpush1.msra.mxu0 0.0
  %8288 = vmatprep.subr.mxu0 0.0
  %8289 = vmatpush1.msra.mxu0 0.0
  %8290 = vmatprep.subr.mxu0 0.0
  %8291 = vmatpush1.msra.mxu0 0.0
  %8292 = vmatprep.subr.mxu0 0.0
  %8293 = vmatpush1.msra.mxu0 0.0
  %8294 = vmatprep.subr.mxu0 0.0
  %8295 = vmatpush1.msra.mxu0 0.0
  %8296 = vmatprep.subr.mxu0 0.0
  %8297 = vmatpush1.msra.mxu0 0.0
  %8298 = vmatprep.subr.mxu0 0.0
  %8299 = vmatpush1.msra.mxu0 0.0
  %8300 = vmatprep.subr.mxu0 0.0
  %8301 = vmatpush1.msra.mxu0 0.0
  %8302 = vmatprep.subr.mxu0 0.0
  %8303 = vmatpush1.msra.mxu0 0.0
  %8304 = vmatprep.subr.mxu0 0.0
  %8305 = vmatpush1.msra.mxu0 0.0
  %8306 = vmatprep.subr.mxu0 0.0
  %8307 = vmatpush1.msra.mxu0 0.0
  %8308 = vmatprep.subr.mxu0 0.0
  %8309 = vmatpush1.msra.mxu0 0.0
  %8310 = vmatprep.mubr.f32.mxu0 0.0
  %8311 = vmatmul.mubr.f32.gmra.mrb[0].mxu0 %v8238
  %v8312 = vpop.f32.mrb[0].mxu0
  %v8313 = vadd.f32 0.0, %v8312
  %v8314 = vpop.f32.mrb[0].mxu0
  %8315 = vmatprep.mubr.f32.mxu0 0.0
  %8316 = vmatmul.mubr.f32.gmra.mrb[0].mxu0 %v8241
  %v8317 = vpop.f32.mrb[0].mxu0
  %v8318 = vadd.f32 0.0, %v8317
  %v8319 = vpop.f32.mrb[0].mxu0
  %8320 = vdwg.mxu0
  %v8322 = vsel %vm7622, %v8108, 0
  %v8325 = vsel %vm7622, %v8109, 0
  %v8328 = vsel %vm8158, %v3955, 0
  %8330 = vmatprep.subr.mxu0 0.0
  %8331 = vmatpush1.msra.mxu0 %v3950
  %8332 = vmatprep.subr.mxu0 0.0
  %8333 = vmatpush1.msra.mxu0 %v8328
  %8334 = vmatprep.subr.mxu0 0.0
  %8335 = vmatpush1.msra.mxu0 0.0
  %8336 = vmatprep.subr.mxu0 0.0
  %8337 = vmatpush1.msra.mxu0 0.0
  %8338 = vmatprep.subr.mxu0 0.0
  %8339 = vmatpush1.msra.mxu0 0.0
  %8340 = vmatprep.subr.mxu0 0.0
  %8341 = vmatpush1.msra.mxu0 0.0
  %8342 = vmatprep.subr.mxu0 0.0
  %8343 = vmatpush1.msra.mxu0 0.0
  %8344 = vmatprep.subr.mxu0 0.0
  %8345 = vmatpush1.msra.mxu0 0.0
  %8346 = vmatprep.subr.mxu0 0.0
  %8347 = vmatpush1.msra.mxu0 0.0
  %8348 = vmatprep.subr.mxu0 0.0
  %8349 = vmatpush1.msra.mxu0 0.0
  %8350 = vmatprep.subr.mxu0 0.0
  %8351 = vmatpush1.msra.mxu0 0.0
  %8352 = vmatprep.subr.mxu0 0.0
  %8353 = vmatpush1.msra.mxu0 0.0
  %8354 = vmatprep.subr.mxu0 0.0
  %8355 = vmatpush1.msra.mxu0 0.0
  %8356 = vmatprep.subr.mxu0 0.0
  %8357 = vmatpush1.msra.mxu0 0.0
  %8358 = vmatprep.subr.mxu0 0.0
  %8359 = vmatpush1.msra.mxu0 0.0
  %8360 = vmatprep.subr.mxu0 0.0
  %8361 = vmatpush1.msra.mxu0 0.0
  %8362 = vmatprep.subr.mxu0 0.0
  %8363 = vmatpush1.msra.mxu0 0.0
  %8364 = vmatprep.subr.mxu0 0.0
  %8365 = vmatpush1.msra.mxu0 0.0
  %8366 = vmatprep.subr.mxu0 0.0
  %8367 = vmatpush1.msra.mxu0 0.0
  %8368 = vmatprep.subr.mxu0 0.0
  %8369 = vmatpush1.msra.mxu0 0.0
  %8370 = vmatprep.subr.mxu0 0.0
  %8371 = vmatpush1.msra.mxu0 0.0
  %8372 = vmatprep.subr.mxu0 0.0
  %8373 = vmatpush1.msra.mxu0 0.0
  %8374 = vmatprep.subr.mxu0 0.0
  %8375 = vmatpush1.msra.mxu0 0.0
  %8376 = vmatprep.subr.mxu0 0.0
  %8377 = vmatpush1.msra.mxu0 0.0
  %8378 = vmatprep.subr.mxu0 0.0
  %8379 = vmatpush1.msra.mxu0 0.0
  %8380 = vmatprep.subr.mxu0 0.0
  %8381 = vmatpush1.msra.mxu0 0.0
  %8382 = vmatprep.subr.mxu0 0.0
  %8383 = vmatpush1.msra.mxu0 0.0
  %8384 = vmatprep.subr.mxu0 0.0
  %8385 = vmatpush1.msra.mxu0 0.0
  %8386 = vmatprep.subr.mxu0 0.0
  %8387 = vmatpush1.msra.mxu0 0.0
  %8388 = vmatprep.subr.mxu0 0.0
  %8389 = vmatpush1.msra.mxu0 0.0
  %8390 = vmatprep.subr.mxu0 0.0
  %8391 = vmatpush1.msra.mxu0 0.0
  %8392 = vmatprep.subr.mxu0 0.0
  %8393 = vmatpush1.msra.mxu0 0.0
  %8394 = vmatprep.mubr.f32.mxu0 0.0
  %8395 = vmatmul.mubr.f32.gmra.mrb[0].mxu0 %v8322
  %v8396 = vpop.f32.mrb[0].mxu0
  %v8397 = vadd.f32 0.0, %v8396
  %v8398 = vpop.f32.mrb[0].mxu0
  %8399 = vmatprep.mubr.f32.mxu0 0.0
  %8400 = vmatmul.mubr.f32.gmra.mrb[0].mxu0 %v8325
  %v8401 = vpop.f32.mrb[0].mxu0
  %v8402 = vadd.f32 0.0, %v8401
  %v8403 = vpop.f32.mrb[0].mxu0
  %8404 = vdwg.mxu0
  %v8406 = vsel %vm7622, %v8110, 0
  %v8409 = vsel %vm7622, %v8111, 0
  %v8412 = vsel %vm8158, %v4030, 0
  %8414 = vmatprep.subr.mxu0 0.0
  %8415 = vmatpush1.msra.mxu0 %v4025
  %8416 = vmatprep.subr.mxu0 0.0
  %8417 = vmatpush1.msra.mxu0 %v8412
  %8418 = vmatprep.subr.mxu0 0.0
  %8419 = vmatpush1.msra.mxu0 0.0
  %8420 = vmatprep.subr.mxu0 0.0
  %8421 = vmatpush1.msra.mxu0 0.0
  %8422 = vmatprep.subr.mxu0 0.0
  %8423 = vmatpush1.msra.mxu0 0.0
  %8424 = vmatprep.subr.mxu0 0.0
  %8425 = vmatpush1.msra.mxu0 0.0
  %8426 = vmatprep.subr.mxu0 0.0
  %8427 = vmatpush1.msra.mxu0 0.0
  %8428 = vmatprep.subr.mxu0 0.0
  %8429 = vmatpush1.msra.mxu0 0.0
  %8430 = vmatprep.subr.mxu0 0.0
  %8431 = vmatpush1.msra.mxu0 0.0
  %8432 = vmatprep.subr.mxu0 0.0
  %8433 = vmatpush1.msra.mxu0 0.0
  %8434 = vmatprep.subr.mxu0 0.0
  %8435 = vmatpush1.msra.mxu0 0.0
  %8436 = vmatprep.subr.mxu0 0.0
  %8437 = vmatpush1.msra.mxu0 0.0
  %8438 = vmatprep.subr.mxu0 0.0
  %8439 = vmatpush1.msra.mxu0 0.0
  %8440 = vmatprep.subr.mxu0 0.0
  %8441 = vmatpush1.msra.mxu0 0.0
  %8442 = vmatprep.subr.mxu0 0.0
  %8443 = vmatpush1.msra.mxu0 0.0
  %8444 = vmatprep.subr.mxu0 0.0
  %8445 = vmatpush1.msra.mxu0 0.0
  %8446 = vmatprep.subr.mxu0 0.0
  %8447 = vmatpush1.msra.mxu0 0.0
  %8448 = vmatprep.subr.mxu0 0.0
  %8449 = vmatpush1.msra.mxu0 0.0
  %8450 = vmatprep.subr.mxu0 0.0
  %8451 = vmatpush1.msra.mxu0 0.0
  %8452 = vmatprep.subr.mxu0 0.0
  %8453 = vmatpush1.msra.mxu0 0.0
  %8454 = vmatprep.subr.mxu0 0.0
  %8455 = vmatpush1.msra.mxu0 0.0
  %8456 = vmatprep.subr.mxu0 0.0
  %8457 = vmatpush1.msra.mxu0 0.0
  %8458 = vmatprep.subr.mxu0 0.0
  %8459 = vmatpush1.msra.mxu0 0.0
  %8460 = vmatprep.subr.mxu0 0.0
  %8461 = vmatpush1.msra.mxu0 0.0
  %8462 = vmatprep.subr.mxu0 0.0
  %8463 = vmatpush1.msra.mxu0 0.0
  %8464 = vmatprep.subr.mxu0 0.0
  %8465 = vmatpush1.msra.mxu0 0.0
  %8466 = vmatprep.subr.mxu0 0.0
  %8467 = vmatpush1.msra.mxu0 0.0
  %8468 = vmatprep.subr.mxu0 0.0
  %8469 = vmatpush1.msra.mxu0 0.0
  %8470 = vmatprep.subr.mxu0 0.0
  %8471 = vmatpush1.msra.mxu0 0.0
  %8472 = vmatprep.subr.mxu0 0.0
  %8473 = vmatpush1.msra.mxu0 0.0
  %8474 = vmatprep.subr.mxu0 0.0
  %8475 = vmatpush1.msra.mxu0 0.0
  %8476 = vmatprep.subr.mxu0 0.0
  %8477 = vmatpush1.msra.mxu0 0.0
  %8478 = vmatprep.mubr.f32.mxu0 0.0
  %8479 = vmatmul.mubr.f32.gmra.mrb[0].mxu0 %v8406
  %v8480 = vpop.f32.mrb[0].mxu0
  %v8481 = vadd.f32 0.0, %v8480
  %v8482 = vpop.f32.mrb[0].mxu0
  %8483 = vmatprep.mubr.f32.mxu0 0.0
  %8484 = vmatmul.mubr.f32.gmra.mrb[0].mxu0 %v8409
  %v8485 = vpop.f32.mrb[0].mxu0
  %v8486 = vadd.f32 0.0, %v8485
  %v8487 = vpop.f32.mrb[0].mxu0
  %8488 = vdwg.mxu0
  %v8490 = vsel %vm7622, %v8112, 0
  %v8493 = vsel %vm7622, %v8113, 0
  %v8496 = vsel %vm8158, %v4105, 0
  %8498 = vmatprep.subr.mxu0 0.0
  %8499 = vmatpush1.msra.mxu0 %v4100
  %8500 = vmatprep.subr.mxu0 0.0
  %8501 = vmatpush1.msra.mxu0 %v8496
  %8502 = vmatprep.subr.mxu0 0.0
  %8503 = vmatpush1.msra.mxu0 0.0
  %8504 = vmatprep.subr.mxu0 0.0
  %8505 = vmatpush1.msra.mxu0 0.0
  %8506 = vmatprep.subr.mxu0 0.0
  %8507 = vmatpush1.msra.mxu0 0.0
  %8508 = vmatprep.subr.mxu0 0.0
  %8509 = vmatpush1.msra.mxu0 0.0
  %8510 = vmatprep.subr.mxu0 0.0
  %8511 = vmatpush1.msra.mxu0 0.0
  %8512 = vmatprep.subr.mxu0 0.0
  %8513 = vmatpush1.msra.mxu0 0.0
  %8514 = vmatprep.subr.mxu0 0.0
  %8515 = vmatpush1.msra.mxu0 0.0
  %8516 = vmatprep.subr.mxu0 0.0
  %8517 = vmatpush1.msra.mxu0 0.0
  %8518 = vmatprep.subr.mxu0 0.0
  %8519 = vmatpush1.msra.mxu0 0.0
  %8520 = vmatprep.subr.mxu0 0.0
  %8521 = vmatpush1.msra.mxu0 0.0
  %8522 = vmatprep.subr.mxu0 0.0
  %8523 = vmatpush1.msra.mxu0 0.0
  %8524 = vmatprep.subr.mxu0 0.0
  %8525 = vmatpush1.msra.mxu0 0.0
  %8526 = vmatprep.subr.mxu0 0.0
  %8527 = vmatpush1.msra.mxu0 0.0
  %8528 = vmatprep.subr.mxu0 0.0
  %8529 = vmatpush1.msra.mxu0 0.0
  %8530 = vmatprep.subr.mxu0 0.0
  %8531 = vmatpush1.msra.mxu0 0.0
  %8532 = vmatprep.subr.mxu0 0.0
  %8533 = vmatpush1.msra.mxu0 0.0
  %8534 = vmatprep.subr.mxu0 0.0
  %8535 = vmatpush1.msra.mxu0 0.0
  %8536 = vmatprep.subr.mxu0 0.0
  %8537 = vmatpush1.msra.mxu0 0.0
  %8538 = vmatprep.subr.mxu0 0.0
  %8539 = vmatpush1.msra.mxu0 0.0
  %8540 = vmatprep.subr.mxu0 0.0
  %8541 = vmatpush1.msra.mxu0 0.0
  %8542 = vmatprep.subr.mxu0 0.0
  %8543 = vmatpush1.msra.mxu0 0.0
  %8544 = vmatprep.subr.mxu0 0.0
  %8545 = vmatpush1.msra.mxu0 0.0
  %8546 = vmatprep.subr.mxu0 0.0
  %8547 = vmatpush1.msra.mxu0 0.0
  %8548 = vmatprep.subr.mxu0 0.0
  %8549 = vmatpush1.msra.mxu0 0.0
  %8550 = vmatprep.subr.mxu0 0.0
  %8551 = vmatpush1.msra.mxu0 0.0
  %8552 = vmatprep.subr.mxu0 0.0
  %8553 = vmatpush1.msra.mxu0 0.0
  %8554 = vmatprep.subr.mxu0 0.0
  %8555 = vmatpush1.msra.mxu0 0.0
  %8556 = vmatprep.subr.mxu0 0.0
  %8557 = vmatpush1.msra.mxu0 0.0
  %8558 = vmatprep.subr.mxu0 0.0
  %8559 = vmatpush1.msra.mxu0 0.0
  %8560 = vmatprep.subr.mxu0 0.0
  %8561 = vmatpush1.msra.mxu0 0.0
  %8562 = vmatprep.mubr.f32.mxu0 0.0
  %8563 = vmatmul.mubr.f32.gmra.mrb[0].mxu0 %v8490
  %v8564 = vpop.f32.mrb[0].mxu0
  %v8565 = vadd.f32 0.0, %v8564
  %v8566 = vpop.f32.mrb[0].mxu0
  %8567 = vmatprep.mubr.f32.mxu0 0.0
  %8568 = vmatmul.mubr.f32.gmra.mrb[0].mxu0 %v8493
  %v8569 = vpop.f32.mrb[0].mxu0
  %v8570 = vadd.f32 0.0, %v8569
  %v8571 = vpop.f32.mrb[0].mxu0
  %8572 = vdwg.mxu0
  %v8574 = vsel %vm7622, %v8114, 0
  %v8577 = vsel %vm7622, %v8115, 0
  %v8580 = vsel %vm8158, %v4180, 0
  %8582 = vmatprep.subr.mxu0 0.0
  %8583 = vmatpush1.msra.mxu0 %v4175
  %8584 = vmatprep.subr.mxu0 0.0
  %8585 = vmatpush1.msra.mxu0 %v8580
  %8586 = vmatprep.subr.mxu0 0.0
  %8587 = vmatpush1.msra.mxu0 0.0
  %8588 = vmatprep.subr.mxu0 0.0
  %8589 = vmatpush1.msra.mxu0 0.0
  %8590 = vmatprep.subr.mxu0 0.0
  %8591 = vmatpush1.msra.mxu0 0.0
  %8592 = vmatprep.subr.mxu0 0.0
  %8593 = vmatpush1.msra.mxu0 0.0
  %8594 = vmatprep.subr.mxu0 0.0
  %8595 = vmatpush1.msra.mxu0 0.0
  %8596 = vmatprep.subr.mxu0 0.0
  %8597 = vmatpush1.msra.mxu0 0.0
  %8598 = vmatprep.subr.mxu0 0.0
  %8599 = vmatpush1.msra.mxu0 0.0
  %8600 = vmatprep.subr.mxu0 0.0
  %8601 = vmatpush1.msra.mxu0 0.0
  %8602 = vmatprep.subr.mxu0 0.0
  %8603 = vmatpush1.msra.mxu0 0.0
  %8604 = vmatprep.subr.mxu0 0.0
  %8605 = vmatpush1.msra.mxu0 0.0
  %8606 = vmatprep.subr.mxu0 0.0
  %8607 = vmatpush1.msra.mxu0 0.0
  %8608 = vmatprep.subr.mxu0 0.0
  %8609 = vmatpush1.msra.mxu0 0.0
  %8610 = vmatprep.subr.mxu0 0.0
  %8611 = vmatpush1.msra.mxu0 0.0
  %8612 = vmatprep.subr.mxu0 0.0
  %8613 = vmatpush1.msra.mxu0 0.0
  %8614 = vmatprep.subr.mxu0 0.0
  %8615 = vmatpush1.msra.mxu0 0.0
  %8616 = vmatprep.subr.mxu0 0.0
  %8617 = vmatpush1.msra.mxu0 0.0
  %8618 = vmatprep.subr.mxu0 0.0
  %8619 = vmatpush1.msra.mxu0 0.0
  %8620 = vmatprep.subr.mxu0 0.0
  %8621 = vmatpush1.msra.mxu0 0.0
  %8622 = vmatprep.subr.mxu0 0.0
  %8623 = vmatpush1.msra.mxu0 0.0
  %8624 = vmatprep.subr.mxu0 0.0
  %8625 = vmatpush1.msra.mxu0 0.0
  %8626 = vmatprep.subr.mxu0 0.0
  %8627 = vmatpush1.msra.mxu0 0.0
  %8628 = vmatprep.subr.mxu0 0.0
  %8629 = vmatpush1.msra.mxu0 0.0
  %8630 = vmatprep.subr.mxu0 0.0
  %8631 = vmatpush1.msra.mxu0 0.0
  %8632 = vmatprep.subr.mxu0 0.0
  %8633 = vmatpush1.msra.mxu0 0.0
  %8634 = vmatprep.subr.mxu0 0.0
  %8635 = vmatpush1.msra.mxu0 0.0
  %8636 = vmatprep.subr.mxu0 0.0
  %8637 = vmatpush1.msra.mxu0 0.0
  %8638 = vmatprep.subr.mxu0 0.0
  %8639 = vmatpush1.msra.mxu0 0.0
  %8640 = vmatprep.subr.mxu0 0.0
  %8641 = vmatpush1.msra.mxu0 0.0
  %8642 = vmatprep.subr.mxu0 0.0
  %8643 = vmatpush1.msra.mxu0 0.0
  %8644 = vmatprep.subr.mxu0 0.0
  %8645 = vmatpush1.msra.mxu0 0.0
  %8646 = vmatprep.mubr.f32.mxu0 0.0
  %8647 = vmatmul.mubr.f32.gmra.mrb[0].mxu0 %v8574
  %v8648 = vpop.f32.mrb[0].mxu0
  %v8649 = vadd.f32 0.0, %v8648
  %v8650 = vpop.f32.mrb[0].mxu0
  %8651 = vmatprep.mubr.f32.mxu0 0.0
  %8652 = vmatmul.mubr.f32.gmra.mrb[0].mxu0 %v8577
  %v8653 = vpop.f32.mrb[0].mxu0
  %v8654 = vadd.f32 0.0, %v8653
  %v8655 = vpop.f32.mrb[0].mxu0
  %8656 = vdwg.mxu0
  %v8658 = vsel %vm7622, %v8116, 0
  %v8661 = vsel %vm7622, %v8117, 0
  %v8664 = vsel %vm8158, %v4255, 0
  %8666 = vmatprep.subr.mxu0 0.0
  %8667 = vmatpush1.msra.mxu0 %v4250
  %8668 = vmatprep.subr.mxu0 0.0
  %8669 = vmatpush1.msra.mxu0 %v8664
  %8670 = vmatprep.subr.mxu0 0.0
  %8671 = vmatpush1.msra.mxu0 0.0
  %8672 = vmatprep.subr.mxu0 0.0
  %8673 = vmatpush1.msra.mxu0 0.0
  %8674 = vmatprep.subr.mxu0 0.0
  %8675 = vmatpush1.msra.mxu0 0.0
  %8676 = vmatprep.subr.mxu0 0.0
  %8677 = vmatpush1.msra.mxu0 0.0
  %8678 = vmatprep.subr.mxu0 0.0
  %8679 = vmatpush1.msra.mxu0 0.0
  %8680 = vmatprep.subr.mxu0 0.0
  %8681 = vmatpush1.msra.mxu0 0.0
  %8682 = vmatprep.subr.mxu0 0.0
  %8683 = vmatpush1.msra.mxu0 0.0
  %8684 = vmatprep.subr.mxu0 0.0
  %8685 = vmatpush1.msra.mxu0 0.0
  %8686 = vmatprep.subr.mxu0 0.0
  %8687 = vmatpush1.msra.mxu0 0.0
  %8688 = vmatprep.subr.mxu0 0.0
  %8689 = vmatpush1.msra.mxu0 0.0
  %8690 = vmatprep.subr.mxu0 0.0
  %8691 = vmatpush1.msra.mxu0 0.0
  %8692 = vmatprep.subr.mxu0 0.0
  %8693 = vmatpush1.msra.mxu0 0.0
  %8694 = vmatprep.subr.mxu0 0.0
  %8695 = vmatpush1.msra.mxu0 0.0
  %8696 = vmatprep.subr.mxu0 0.0
  %8697 = vmatpush1.msra.mxu0 0.0
  %8698 = vmatprep.subr.mxu0 0.0
  %8699 = vmatpush1.msra.mxu0 0.0
  %8700 = vmatprep.subr.mxu0 0.0
  %8701 = vmatpush1.msra.mxu0 0.0
  %8702 = vmatprep.subr.mxu0 0.0
  %8703 = vmatpush1.msra.mxu0 0.0
  %8704 = vmatprep.subr.mxu0 0.0
  %8705 = vmatpush1.msra.mxu0 0.0
  %8706 = vmatprep.subr.mxu0 0.0
  %8707 = vmatpush1.msra.mxu0 0.0
  %8708 = vmatprep.subr.mxu0 0.0
  %8709 = vmatpush1.msra.mxu0 0.0
  %8710 = vmatprep.subr.mxu0 0.0
  %8711 = vmatpush1.msra.mxu0 0.0
  %8712 = vmatprep.subr.mxu0 0.0
  %8713 = vmatpush1.msra.mxu0 0.0
  %8714 = vmatprep.subr.mxu0 0.0
  %8715 = vmatpush1.msra.mxu0 0.0
  %8716 = vmatprep.subr.mxu0 0.0
  %8717 = vmatpush1.msra.mxu0 0.0
  %8718 = vmatprep.subr.mxu0 0.0
  %8719 = vmatpush1.msra.mxu0 0.0
  %8720 = vmatprep.subr.mxu0 0.0
  %8721 = vmatpush1.msra.mxu0 0.0
  %8722 = vmatprep.subr.mxu0 0.0
  %8723 = vmatpush1.msra.mxu0 0.0
  %8724 = vmatprep.subr.mxu0 0.0
  %8725 = vmatpush1.msra.mxu0 0.0
  %8726 = vmatprep.subr.mxu0 0.0
  %8727 = vmatpush1.msra.mxu0 0.0
  %8728 = vmatprep.subr.mxu0 0.0
  %8729 = vmatpush1.msra.mxu0 0.0
  %8730 = vmatprep.mubr.f32.mxu0 0.0
  %8731 = vmatmul.mubr.f32.gmra.mrb[0].mxu0 %v8658
  %v8732 = vpop.f32.mrb[0].mxu0
  %v8733 = vadd.f32 0.0, %v8732
  %v8734 = vpop.f32.mrb[0].mxu0
  %8735 = vmatprep.mubr.f32.mxu0 0.0
  %8736 = vmatmul.mubr.f32.gmra.mrb[0].mxu0 %v8661
  %v8737 = vpop.f32.mrb[0].mxu0
  %v8738 = vadd.f32 0.0, %v8737
  %v8739 = vpop.f32.mrb[0].mxu0
  %8740 = vdwg.mxu0
  %v8742 = vsel %vm7622, %v8118, 0
  %v8745 = vsel %vm7622, %v8119, 0
  %v8748 = vsel %vm8158, %v4330, 0
  %8750 = vmatprep.subr.mxu0 0.0
  %8751 = vmatpush1.msra.mxu0 %v4325
  %8752 = vmatprep.subr.mxu0 0.0
  %8753 = vmatpush1.msra.mxu0 %v8748
  %8754 = vmatprep.subr.mxu0 0.0
  %8755 = vmatpush1.msra.mxu0 0.0
  %8756 = vmatprep.subr.mxu0 0.0
  %8757 = vmatpush1.msra.mxu0 0.0
  %8758 = vmatprep.subr.mxu0 0.0
  %8759 = vmatpush1.msra.mxu0 0.0
  %8760 = vmatprep.subr.mxu0 0.0
  %8761 = vmatpush1.msra.mxu0 0.0
  %8762 = vmatprep.subr.mxu0 0.0
  %8763 = vmatpush1.msra.mxu0 0.0
  %8764 = vmatprep.subr.mxu0 0.0
  %8765 = vmatpush1.msra.mxu0 0.0
  %8766 = vmatprep.subr.mxu0 0.0
  %8767 = vmatpush1.msra.mxu0 0.0
  %8768 = vmatprep.subr.mxu0 0.0
  %8769 = vmatpush1.msra.mxu0 0.0
  %8770 = vmatprep.subr.mxu0 0.0
  %8771 = vmatpush1.msra.mxu0 0.0
  %8772 = vmatprep.subr.mxu0 0.0
  %8773 = vmatpush1.msra.mxu0 0.0
  %8774 = vmatprep.subr.mxu0 0.0
  %8775 = vmatpush1.msra.mxu0 0.0
  %8776 = vmatprep.subr.mxu0 0.0
  %8777 = vmatpush1.msra.mxu0 0.0
  %8778 = vmatprep.subr.mxu0 0.0
  %8779 = vmatpush1.msra.mxu0 0.0
  %8780 = vmatprep.subr.mxu0 0.0
  %8781 = vmatpush1.msra.mxu0 0.0
  %8782 = vmatprep.subr.mxu0 0.0
  %8783 = vmatpush1.msra.mxu0 0.0
  %8784 = vmatprep.subr.mxu0 0.0
  %8785 = vmatpush1.msra.mxu0 0.0
  %8786 = vmatprep.subr.mxu0 0.0
  %8787 = vmatpush1.msra.mxu0 0.0
  %8788 = vmatprep.subr.mxu0 0.0
  %8789 = vmatpush1.msra.mxu0 0.0
  %8790 = vmatprep.subr.mxu0 0.0
  %8791 = vmatpush1.msra.mxu0 0.0
  %8792 = vmatprep.subr.mxu0 0.0
  %8793 = vmatpush1.msra.mxu0 0.0
  %8794 = vmatprep.subr.mxu0 0.0
  %8795 = vmatpush1.msra.mxu0 0.0
  %8796 = vmatprep.subr.mxu0 0.0
  %8797 = vmatpush1.msra.mxu0 0.0
  %8798 = vmatprep.subr.mxu0 0.0
  %8799 = vmatpush1.msra.mxu0 0.0
  %8800 = vmatprep.subr.mxu0 0.0
  %8801 = vmatpush1.msra.mxu0 0.0
  %8802 = vmatprep.subr.mxu0 0.0
  %8803 = vmatpush1.msra.mxu0 0.0
  %8804 = vmatprep.subr.mxu0 0.0
  %8805 = vmatpush1.msra.mxu0 0.0
  %8806 = vmatprep.subr.mxu0 0.0
  %8807 = vmatpush1.msra.mxu0 0.0
  %8808 = vmatprep.subr.mxu0 0.0
  %8809 = vmatpush1.msra.mxu0 0.0
  %8810 = vmatprep.subr.mxu0 0.0
  %8811 = vmatpush1.msra.mxu0 0.0
  %8812 = vmatprep.subr.mxu0 0.0
  %8813 = vmatpush1.msra.mxu0 0.0
  %8814 = vmatprep.mubr.f32.mxu0 0.0
  %8815 = vmatmul.mubr.f32.gmra.mrb[0].mxu0 %v8742
  %v8816 = vpop.f32.mrb[0].mxu0
  %v8817 = vadd.f32 0.0, %v8816
  %v8818 = vpop.f32.mrb[0].mxu0
  %8819 = vmatprep.mubr.f32.mxu0 0.0
  %8820 = vmatmul.mubr.f32.gmra.mrb[0].mxu0 %v8745
  %v8821 = vpop.f32.mrb[0].mxu0
  %v8822 = vadd.f32 0.0, %v8821
  %v8823 = vpop.f32.mrb[0].mxu0
  %8824 = vdwg.mxu0
  %v8826 = vsel %vm7622, %v8120, 0
  %v8829 = vsel %vm7622, %v8121, 0
  %v8832 = vsel %vm8158, %v4405, 0
  %8834 = vmatprep.subr.mxu0 0.0
  %8835 = vmatpush1.msra.mxu0 %v4400
  %8836 = vmatprep.subr.mxu0 0.0
  %8837 = vmatpush1.msra.mxu0 %v8832
  %8838 = vmatprep.subr.mxu0 0.0
  %8839 = vmatpush1.msra.mxu0 0.0
  %8840 = vmatprep.subr.mxu0 0.0
  %8841 = vmatpush1.msra.mxu0 0.0
  %8842 = vmatprep.subr.mxu0 0.0
  %8843 = vmatpush1.msra.mxu0 0.0
  %8844 = vmatprep.subr.mxu0 0.0
  %8845 = vmatpush1.msra.mxu0 0.0
  %8846 = vmatprep.subr.mxu0 0.0
  %8847 = vmatpush1.msra.mxu0 0.0
  %8848 = vmatprep.subr.mxu0 0.0
  %8849 = vmatpush1.msra.mxu0 0.0
  %8850 = vmatprep.subr.mxu0 0.0
  %8851 = vmatpush1.msra.mxu0 0.0
  %8852 = vmatprep.subr.mxu0 0.0
  %8853 = vmatpush1.msra.mxu0 0.0
  %8854 = vmatprep.subr.mxu0 0.0
  %8855 = vmatpush1.msra.mxu0 0.0
  %8856 = vmatprep.subr.mxu0 0.0
  %8857 = vmatpush1.msra.mxu0 0.0
  %8858 = vmatprep.subr.mxu0 0.0
  %8859 = vmatpush1.msra.mxu0 0.0
  %8860 = vmatprep.subr.mxu0 0.0
  %8861 = vmatpush1.msra.mxu0 0.0
  %8862 = vmatprep.subr.mxu0 0.0
  %8863 = vmatpush1.msra.mxu0 0.0
  %8864 = vmatprep.subr.mxu0 0.0
  %8865 = vmatpush1.msra.mxu0 0.0
  %8866 = vmatprep.subr.mxu0 0.0
  %8867 = vmatpush1.msra.mxu0 0.0
  %8868 = vmatprep.subr.mxu0 0.0
  %8869 = vmatpush1.msra.mxu0 0.0
  %8870 = vmatprep.subr.mxu0 0.0
  %8871 = vmatpush1.msra.mxu0 0.0
  %8872 = vmatprep.subr.mxu0 0.0
  %8873 = vmatpush1.msra.mxu0 0.0
  %8874 = vmatprep.subr.mxu0 0.0
  %8875 = vmatpush1.msra.mxu0 0.0
  %8876 = vmatprep.subr.mxu0 0.0
  %8877 = vmatpush1.msra.mxu0 0.0
  %8878 = vmatprep.subr.mxu0 0.0
  %8879 = vmatpush1.msra.mxu0 0.0
  %8880 = vmatprep.subr.mxu0 0.0
  %8881 = vmatpush1.msra.mxu0 0.0
  %8882 = vmatprep.subr.mxu0 0.0
  %8883 = vmatpush1.msra.mxu0 0.0
  %8884 = vmatprep.subr.mxu0 0.0
  %8885 = vmatpush1.msra.mxu0 0.0
  %8886 = vmatprep.subr.mxu0 0.0
  %8887 = vmatpush1.msra.mxu0 0.0
  %8888 = vmatprep.subr.mxu0 0.0
  %8889 = vmatpush1.msra.mxu0 0.0
  %8890 = vmatprep.subr.mxu0 0.0
  %8891 = vmatpush1.msra.mxu0 0.0
  %8892 = vmatprep.subr.mxu0 0.0
  %8893 = vmatpush1.msra.mxu0 0.0
  %8894 = vmatprep.subr.mxu0 0.0
  %8895 = vmatpush1.msra.mxu0 0.0
  %8896 = vmatprep.subr.mxu0 0.0
  %8897 = vmatpush1.msra.mxu0 0.0
  %8898 = vmatprep.mubr.f32.mxu0 0.0
  %8899 = vmatmul.mubr.f32.gmra.mrb[0].mxu0 %v8826
  %v8900 = vpop.f32.mrb[0].mxu0
  %v8901 = vadd.f32 0.0, %v8900
  %v8902 = vpop.f32.mrb[0].mxu0
  %8903 = vmatprep.mubr.f32.mxu0 0.0
  %8904 = vmatmul.mubr.f32.gmra.mrb[0].mxu0 %v8829
  %v8905 = vpop.f32.mrb[0].mxu0
  %v8906 = vadd.f32 0.0, %v8905
  %v8907 = vpop.f32.mrb[0].mxu0
  %8908 = vdwg.mxu0
  %v8910 = vsel %vm7622, %v8122, 0
  %v8913 = vsel %vm7622, %v8123, 0
  %v8916 = vsel %vm8158, %v4480, 0
  %8918 = vmatprep.subr.mxu0 0.0
  %8919 = vmatpush1.msra.mxu0 %v4475
  %8920 = vmatprep.subr.mxu0 0.0
  %8921 = vmatpush1.msra.mxu0 %v8916
  %8922 = vmatprep.subr.mxu0 0.0
  %8923 = vmatpush1.msra.mxu0 0.0
  %8924 = vmatprep.subr.mxu0 0.0
  %8925 = vmatpush1.msra.mxu0 0.0
  %8926 = vmatprep.subr.mxu0 0.0
  %8927 = vmatpush1.msra.mxu0 0.0
  %8928 = vmatprep.subr.mxu0 0.0
  %8929 = vmatpush1.msra.mxu0 0.0
  %8930 = vmatprep.subr.mxu0 0.0
  %8931 = vmatpush1.msra.mxu0 0.0
  %8932 = vmatprep.subr.mxu0 0.0
  %8933 = vmatpush1.msra.mxu0 0.0
  %8934 = vmatprep.subr.mxu0 0.0
  %8935 = vmatpush1.msra.mxu0 0.0
  %8936 = vmatprep.subr.mxu0 0.0
  %8937 = vmatpush1.msra.mxu0 0.0
  %8938 = vmatprep.subr.mxu0 0.0
  %8939 = vmatpush1.msra.mxu0 0.0
  %8940 = vmatprep.subr.mxu0 0.0
  %8941 = vmatpush1.msra.mxu0 0.0
  %8942 = vmatprep.subr.mxu0 0.0
  %8943 = vmatpush1.msra.mxu0 0.0
  %8944 = vmatprep.subr.mxu0 0.0
  %8945 = vmatpush1.msra.mxu0 0.0
  %8946 = vmatprep.subr.mxu0 0.0
  %8947 = vmatpush1.msra.mxu0 0.0
  %8948 = vmatprep.subr.mxu0 0.0
  %8949 = vmatpush1.msra.mxu0 0.0
  %8950 = vmatprep.subr.mxu0 0.0
  %8951 = vmatpush1.msra.mxu0 0.0
  %8952 = vmatprep.subr.mxu0 0.0
  %8953 = vmatpush1.msra.mxu0 0.0
  %8954 = vmatprep.subr.mxu0 0.0
  %8955 = vmatpush1.msra.mxu0 0.0
  %8956 = vmatprep.subr.mxu0 0.0
  %8957 = vmatpush1.msra.mxu0 0.0
  %8958 = vmatprep.subr.mxu0 0.0
  %8959 = vmatpush1.msra.mxu0 0.0
  %8960 = vmatprep.subr.mxu0 0.0
  %8961 = vmatpush1.msra.mxu0 0.0
  %8962 = vmatprep.subr.mxu0 0.0
  %8963 = vmatpush1.msra.mxu0 0.0
  %8964 = vmatprep.subr.mxu0 0.0
  %8965 = vmatpush1.msra.mxu0 0.0
  %8966 = vmatprep.subr.mxu0 0.0
  %8967 = vmatpush1.msra.mxu0 0.0
  %8968 = vmatprep.subr.mxu0 0.0
  %8969 = vmatpush1.msra.mxu0 0.0
  %8970 = vmatprep.subr.mxu0 0.0
  %8971 = vmatpush1.msra.mxu0 0.0
  %8972 = vmatprep.subr.mxu0 0.0
  %8973 = vmatpush1.msra.mxu0 0.0
  %8974 = vmatprep.subr.mxu0 0.0
  %8975 = vmatpush1.msra.mxu0 0.0
  %8976 = vmatprep.subr.mxu0 0.0
  %8977 = vmatpush1.msra.mxu0 0.0
  %8978 = vmatprep.subr.mxu0 0.0
  %8979 = vmatpush1.msra.mxu0 0.0
  %8980 = vmatprep.subr.mxu0 0.0
  %8981 = vmatpush1.msra.mxu0 0.0
  %8982 = vmatprep.mubr.f32.mxu0 0.0
  %8983 = vmatmul.mubr.f32.gmra.mrb[0].mxu0 %v8910
  %v8984 = vpop.f32.mrb[0].mxu0
  %v8985 = vadd.f32 0.0, %v8984
  %v8986 = vpop.f32.mrb[0].mxu0
  %8987 = vmatprep.mubr.f32.mxu0 0.0
  %8988 = vmatmul.mubr.f32.gmra.mrb[0].mxu0 %v8913
  %v8989 = vpop.f32.mrb[0].mxu0
  %v8990 = vadd.f32 0.0, %v8989
  %v8991 = vpop.f32.mrb[0].mxu0
  %8992 = vdwg.mxu0
  %v8994 = vsel %vm7622, %v8124, 0
  %v8997 = vsel %vm7622, %v8125, 0
  %v9000 = vsel %vm8158, %v4555, 0
  %9002 = vmatprep.subr.mxu0 0.0
  %9003 = vmatpush1.msra.mxu0 %v4550
  %9004 = vmatprep.subr.mxu0 0.0
  %9005 = vmatpush1.msra.mxu0 %v9000
  %9006 = vmatprep.subr.mxu0 0.0
  %9007 = vmatpush1.msra.mxu0 0.0
  %9008 = vmatprep.subr.mxu0 0.0
  %9009 = vmatpush1.msra.mxu0 0.0
  %9010 = vmatprep.subr.mxu0 0.0
  %9011 = vmatpush1.msra.mxu0 0.0
  %9012 = vmatprep.subr.mxu0 0.0
  %9013 = vmatpush1.msra.mxu0 0.0
  %9014 = vmatprep.subr.mxu0 0.0
  %9015 = vmatpush1.msra.mxu0 0.0
  %9016 = vmatprep.subr.mxu0 0.0
  %9017 = vmatpush1.msra.mxu0 0.0
  %9018 = vmatprep.subr.mxu0 0.0
  %9019 = vmatpush1.msra.mxu0 0.0
  %9020 = vmatprep.subr.mxu0 0.0
  %9021 = vmatpush1.msra.mxu0 0.0
  %9022 = vmatprep.subr.mxu0 0.0
  %9023 = vmatpush1.msra.mxu0 0.0
  %9024 = vmatprep.subr.mxu0 0.0
  %9025 = vmatpush1.msra.mxu0 0.0
  %9026 = vmatprep.subr.mxu0 0.0
  %9027 = vmatpush1.msra.mxu0 0.0
  %9028 = vmatprep.subr.mxu0 0.0
  %9029 = vmatpush1.msra.mxu0 0.0
  %9030 = vmatprep.subr.mxu0 0.0
  %9031 = vmatpush1.msra.mxu0 0.0
  %9032 = vmatprep.subr.mxu0 0.0
  %9033 = vmatpush1.msra.mxu0 0.0
  %9034 = vmatprep.subr.mxu0 0.0
  %9035 = vmatpush1.msra.mxu0 0.0
  %9036 = vmatprep.subr.mxu0 0.0
  %9037 = vmatpush1.msra.mxu0 0.0
  %9038 = vmatprep.subr.mxu0 0.0
  %9039 = vmatpush1.msra.mxu0 0.0
  %9040 = vmatprep.subr.mxu0 0.0
  %9041 = vmatpush1.msra.mxu0 0.0
  %9042 = vmatprep.subr.mxu0 0.0
  %9043 = vmatpush1.msra.mxu0 0.0
  %9044 = vmatprep.subr.mxu0 0.0
  %9045 = vmatpush1.msra.mxu0 0.0
  %9046 = vmatprep.subr.mxu0 0.0
  %9047 = vmatpush1.msra.mxu0 0.0
  %9048 = vmatprep.subr.mxu0 0.0
  %9049 = vmatpush1.msra.mxu0 0.0
  %9050 = vmatprep.subr.mxu0 0.0
  %9051 = vmatpush1.msra.mxu0 0.0
  %9052 = vmatprep.subr.mxu0 0.0
  %9053 = vmatpush1.msra.mxu0 0.0
  %9054 = vmatprep.subr.mxu0 0.0
  %9055 = vmatpush1.msra.mxu0 0.0
  %9056 = vmatprep.subr.mxu0 0.0
  %9057 = vmatpush1.msra.mxu0 0.0
  %9058 = vmatprep.subr.mxu0 0.0
  %9059 = vmatpush1.msra.mxu0 0.0
  %9060 = vmatprep.subr.mxu0 0.0
  %9061 = vmatpush1.msra.mxu0 0.0
  %9062 = vmatprep.subr.mxu0 0.0
  %9063 = vmatpush1.msra.mxu0 0.0
  %9064 = vmatprep.subr.mxu0 0.0
  %9065 = vmatpush1.msra.mxu0 0.0
  %9066 = vmatprep.mubr.f32.mxu0 0.0
  %9067 = vmatmul.mubr.f32.gmra.mrb[0].mxu0 %v8994
  %v9068 = vpop.f32.mrb[0].mxu0
  %v9069 = vadd.f32 0.0, %v9068
  %v9070 = vpop.f32.mrb[0].mxu0
  %9071 = vmatprep.mubr.f32.mxu0 0.0
  %9072 = vmatmul.mubr.f32.gmra.mrb[0].mxu0 %v8997
  %v9073 = vpop.f32.mrb[0].mxu0
  %v9074 = vadd.f32 0.0, %v9073
  %v9075 = vpop.f32.mrb[0].mxu0
  %9076 = vdwg.mxu0
  %v9078 = vsel %vm7622, %v8126, 0
  %v9081 = vsel %vm7622, %v8127, 0
  %v9084 = vsel %vm8158, %v4630, 0
  %9086 = vmatprep.subr.mxu0 0.0
  %9087 = vmatpush1.msra.mxu0 %v4625
  %9088 = vmatprep.subr.mxu0 0.0
  %9089 = vmatpush1.msra.mxu0 %v9084
  %9090 = vmatprep.subr.mxu0 0.0
  %9091 = vmatpush1.msra.mxu0 0.0
  %9092 = vmatprep.subr.mxu0 0.0
  %9093 = vmatpush1.msra.mxu0 0.0
  %9094 = vmatprep.subr.mxu0 0.0
  %9095 = vmatpush1.msra.mxu0 0.0
  %9096 = vmatprep.subr.mxu0 0.0
  %9097 = vmatpush1.msra.mxu0 0.0
  %9098 = vmatprep.subr.mxu0 0.0
  %9099 = vmatpush1.msra.mxu0 0.0
  %9100 = vmatprep.subr.mxu0 0.0
  %9101 = vmatpush1.msra.mxu0 0.0
  %9102 = vmatprep.subr.mxu0 0.0
  %9103 = vmatpush1.msra.mxu0 0.0
  %9104 = vmatprep.subr.mxu0 0.0
  %9105 = vmatpush1.msra.mxu0 0.0
  %9106 = vmatprep.subr.mxu0 0.0
  %9107 = vmatpush1.msra.mxu0 0.0
  %9108 = vmatprep.subr.mxu0 0.0
  %9109 = vmatpush1.msra.mxu0 0.0
  %9110 = vmatprep.subr.mxu0 0.0
  %9111 = vmatpush1.msra.mxu0 0.0
  %9112 = vmatprep.subr.mxu0 0.0
  %9113 = vmatpush1.msra.mxu0 0.0
  %9114 = vmatprep.subr.mxu0 0.0
  %9115 = vmatpush1.msra.mxu0 0.0
  %9116 = vmatprep.subr.mxu0 0.0
  %9117 = vmatpush1.msra.mxu0 0.0
  %9118 = vmatprep.subr.mxu0 0.0
  %9119 = vmatpush1.msra.mxu0 0.0
  %9120 = vmatprep.subr.mxu0 0.0
  %9121 = vmatpush1.msra.mxu0 0.0
  %9122 = vmatprep.subr.mxu0 0.0
  %9123 = vmatpush1.msra.mxu0 0.0
  %9124 = vmatprep.subr.mxu0 0.0
  %9125 = vmatpush1.msra.mxu0 0.0
  %9126 = vmatprep.subr.mxu0 0.0
  %9127 = vmatpush1.msra.mxu0 0.0
  %9128 = vmatprep.subr.mxu0 0.0
  %9129 = vmatpush1.msra.mxu0 0.0
  %9130 = vmatprep.subr.mxu0 0.0
  %9131 = vmatpush1.msra.mxu0 0.0
  %9132 = vmatprep.subr.mxu0 0.0
  %9133 = vmatpush1.msra.mxu0 0.0
  %9134 = vmatprep.subr.mxu0 0.0
  %9135 = vmatpush1.msra.mxu0 0.0
  %9136 = vmatprep.subr.mxu0 0.0
  %9137 = vmatpush1.msra.mxu0 0.0
  %9138 = vmatprep.subr.mxu0 0.0
  %9139 = vmatpush1.msra.mxu0 0.0
  %9140 = vmatprep.subr.mxu0 0.0
  %9141 = vmatpush1.msra.mxu0 0.0
  %9142 = vmatprep.subr.mxu0 0.0
  %9143 = vmatpush1.msra.mxu0 0.0
  %9144 = vmatprep.subr.mxu0 0.0
  %9145 = vmatpush1.msra.mxu0 0.0
  %9146 = vmatprep.subr.mxu0 0.0
  %9147 = vmatpush1.msra.mxu0 0.0
  %9148 = vmatprep.subr.mxu0 0.0
  %9149 = vmatpush1.msra.mxu0 0.0
  %9150 = vmatprep.mubr.f32.mxu0 0.0
  %9151 = vmatmul.mubr.f32.gmra.mrb[0].mxu0 %v9078
  %v9152 = vpop.f32.mrb[0].mxu0
  %v9153 = vadd.f32 0.0, %v9152
  %v9154 = vpop.f32.mrb[0].mxu0
  %9155 = vmatprep.mubr.f32.mxu0 0.0
  %9156 = vmatmul.mubr.f32.gmra.mrb[0].mxu0 %v9081
  %v9157 = vpop.f32.mrb[0].mxu0
  %v9158 = vadd.f32 0.0, %v9157
  %v9159 = vpop.f32.mrb[0].mxu0
  %9160 = vdwg.mxu0
  %v9162 = vsel %vm7622, %v8128, 0
  %v9165 = vsel %vm7622, %v8129, 0
  %v9168 = vsel %vm8158, %v4705, 0
  %9170 = vmatprep.subr.mxu0 0.0
  %9171 = vmatpush1.msra.mxu0 %v4700
  %9172 = vmatprep.subr.mxu0 0.0
  %9173 = vmatpush1.msra.mxu0 %v9168
  %9174 = vmatprep.subr.mxu0 0.0
  %9175 = vmatpush1.msra.mxu0 0.0
  %9176 = vmatprep.subr.mxu0 0.0
  %9177 = vmatpush1.msra.mxu0 0.0
  %9178 = vmatprep.subr.mxu0 0.0
  %9179 = vmatpush1.msra.mxu0 0.0
  %9180 = vmatprep.subr.mxu0 0.0
  %9181 = vmatpush1.msra.mxu0 0.0
  %9182 = vmatprep.subr.mxu0 0.0
  %9183 = vmatpush1.msra.mxu0 0.0
  %9184 = vmatprep.subr.mxu0 0.0
  %9185 = vmatpush1.msra.mxu0 0.0
  %9186 = vmatprep.subr.mxu0 0.0
  %9187 = vmatpush1.msra.mxu0 0.0
  %9188 = vmatprep.subr.mxu0 0.0
  %9189 = vmatpush1.msra.mxu0 0.0
  %9190 = vmatprep.subr.mxu0 0.0
  %9191 = vmatpush1.msra.mxu0 0.0
  %9192 = vmatprep.subr.mxu0 0.0
  %9193 = vmatpush1.msra.mxu0 0.0
  %9194 = vmatprep.subr.mxu0 0.0
  %9195 = vmatpush1.msra.mxu0 0.0
  %9196 = vmatprep.subr.mxu0 0.0
  %9197 = vmatpush1.msra.mxu0 0.0
  %9198 = vmatprep.subr.mxu0 0.0
  %9199 = vmatpush1.msra.mxu0 0.0
  %9200 = vmatprep.subr.mxu0 0.0
  %9201 = vmatpush1.msra.mxu0 0.0
  %9202 = vmatprep.subr.mxu0 0.0
  %9203 = vmatpush1.msra.mxu0 0.0
  %9204 = vmatprep.subr.mxu0 0.0
  %9205 = vmatpush1.msra.mxu0 0.0
  %9206 = vmatprep.subr.mxu0 0.0
  %9207 = vmatpush1.msra.mxu0 0.0
  %9208 = vmatprep.subr.mxu0 0.0
  %9209 = vmatpush1.msra.mxu0 0.0
  %9210 = vmatprep.subr.mxu0 0.0
  %9211 = vmatpush1.msra.mxu0 0.0
  %9212 = vmatprep.subr.mxu0 0.0
  %9213 = vmatpush1.msra.mxu0 0.0
  %9214 = vmatprep.subr.mxu0 0.0
  %9215 = vmatpush1.msra.mxu0 0.0
  %9216 = vmatprep.subr.mxu0 0.0
  %9217 = vmatpush1.msra.mxu0 0.0
  %9218 = vmatprep.subr.mxu0 0.0
  %9219 = vmatpush1.msra.mxu0 0.0
  %9220 = vmatprep.subr.mxu0 0.0
  %9221 = vmatpush1.msra.mxu0 0.0
  %9222 = vmatprep.subr.mxu0 0.0
  %9223 = vmatpush1.msra.mxu0 0.0
  %9224 = vmatprep.subr.mxu0 0.0
  %9225 = vmatpush1.msra.mxu0 0.0
  %9226 = vmatprep.subr.mxu0 0.0
  %9227 = vmatpush1.msra.mxu0 0.0
  %9228 = vmatprep.subr.mxu0 0.0
  %9229 = vmatpush1.msra.mxu0 0.0
  %9230 = vmatprep.subr.mxu0 0.0
  %9231 = vmatpush1.msra.mxu0 0.0
  %9232 = vmatprep.subr.mxu0 0.0
  %9233 = vmatpush1.msra.mxu0 0.0
  %9234 = vmatprep.mubr.f32.mxu0 0.0
  %9235 = vmatmul.mubr.f32.gmra.mrb[0].mxu0 %v9162
  %v9236 = vpop.f32.mrb[0].mxu0
  %v9237 = vadd.f32 0.0, %v9236
  %v9238 = vpop.f32.mrb[0].mxu0
  %9239 = vmatprep.mubr.f32.mxu0 0.0
  %9240 = vmatmul.mubr.f32.gmra.mrb[0].mxu0 %v9165
  %v9241 = vpop.f32.mrb[0].mxu0
  %v9242 = vadd.f32 0.0, %v9241
  %v9243 = vpop.f32.mrb[0].mxu0
  %9244 = vdwg.mxu0
  %v9246 = vsel %vm7622, %v8130, 0
  %v9249 = vsel %vm7622, %v8131, 0
  %v9252 = vsel %vm8158, %v4780, 0
  %9254 = vmatprep.subr.mxu0 0.0
  %9255 = vmatpush1.msra.mxu0 %v4775
  %9256 = vmatprep.subr.mxu0 0.0
  %9257 = vmatpush1.msra.mxu0 %v9252
  %9258 = vmatprep.subr.mxu0 0.0
  %9259 = vmatpush1.msra.mxu0 0.0
  %9260 = vmatprep.subr.mxu0 0.0
  %9261 = vmatpush1.msra.mxu0 0.0
  %9262 = vmatprep.subr.mxu0 0.0
  %9263 = vmatpush1.msra.mxu0 0.0
  %9264 = vmatprep.subr.mxu0 0.0
  %9265 = vmatpush1.msra.mxu0 0.0
  %9266 = vmatprep.subr.mxu0 0.0
  %9267 = vmatpush1.msra.mxu0 0.0
  %9268 = vmatprep.subr.mxu0 0.0
  %9269 = vmatpush1.msra.mxu0 0.0
  %9270 = vmatprep.subr.mxu0 0.0
  %9271 = vmatpush1.msra.mxu0 0.0
  %9272 = vmatprep.subr.mxu0 0.0
  %9273 = vmatpush1.msra.mxu0 0.0
  %9274 = vmatprep.subr.mxu0 0.0
  %9275 = vmatpush1.msra.mxu0 0.0
  %9276 = vmatprep.subr.mxu0 0.0
  %9277 = vmatpush1.msra.mxu0 0.0
  %9278 = vmatprep.subr.mxu0 0.0
  %9279 = vmatpush1.msra.mxu0 0.0
  %9280 = vmatprep.subr.mxu0 0.0
  %9281 = vmatpush1.msra.mxu0 0.0
  %9282 = vmatprep.subr.mxu0 0.0
  %9283 = vmatpush1.msra.mxu0 0.0
  %9284 = vmatprep.subr.mxu0 0.0
  %9285 = vmatpush1.msra.mxu0 0.0
  %9286 = vmatprep.subr.mxu0 0.0
  %9287 = vmatpush1.msra.mxu0 0.0
  %9288 = vmatprep.subr.mxu0 0.0
  %9289 = vmatpush1.msra.mxu0 0.0
  %9290 = vmatprep.subr.mxu0 0.0
  %9291 = vmatpush1.msra.mxu0 0.0
  %9292 = vmatprep.subr.mxu0 0.0
  %9293 = vmatpush1.msra.mxu0 0.0
  %9294 = vmatprep.subr.mxu0 0.0
  %9295 = vmatpush1.msra.mxu0 0.0
  %9296 = vmatprep.subr.mxu0 0.0
  %9297 = vmatpush1.msra.mxu0 0.0
  %9298 = vmatprep.subr.mxu0 0.0
  %9299 = vmatpush1.msra.mxu0 0.0
  %9300 = vmatprep.subr.mxu0 0.0
  %9301 = vmatpush1.msra.mxu0 0.0
  %9302 = vmatprep.subr.mxu0 0.0
  %9303 = vmatpush1.msra.mxu0 0.0
  %9304 = vmatprep.subr.mxu0 0.0
  %9305 = vmatpush1.msra.mxu0 0.0
  %9306 = vmatprep.subr.mxu0 0.0
  %9307 = vmatpush1.msra.mxu0 0.0
  %9308 = vmatprep.subr.mxu0 0.0
  %9309 = vmatpush1.msra.mxu0 0.0
  %9310 = vmatprep.subr.mxu0 0.0
  %9311 = vmatpush1.msra.mxu0 0.0
  %9312 = vmatprep.subr.mxu0 0.0
  %9313 = vmatpush1.msra.mxu0 0.0
  %9314 = vmatprep.subr.mxu0 0.0
  %9315 = vmatpush1.msra.mxu0 0.0
  %9316 = vmatprep.subr.mxu0 0.0
  %9317 = vmatpush1.msra.mxu0 0.0
  %9318 = vmatprep.mubr.f32.mxu0 0.0
  %9319 = vmatmul.mubr.f32.gmra.mrb[0].mxu0 %v9246
  %v9320 = vpop.f32.mrb[0].mxu0
  %v9321 = vadd.f32 0.0, %v9320
  %v9322 = vpop.f32.mrb[0].mxu0
  %9323 = vmatprep.mubr.f32.mxu0 0.0
  %9324 = vmatmul.mubr.f32.gmra.mrb[0].mxu0 %v9249
  %v9325 = vpop.f32.mrb[0].mxu0
  %v9326 = vadd.f32 0.0, %v9325
  %v9327 = vpop.f32.mrb[0].mxu0
  %9328 = vdwg.mxu0
  %v9330 = vsel %vm7622, %v8132, 0
  %v9333 = vsel %vm7622, %v8133, 0
  %v9336 = vsel %vm8158, %v4855, 0
  %9338 = vmatprep.subr.mxu0 0.0
  %9339 = vmatpush1.msra.mxu0 %v4850
  %9340 = vmatprep.subr.mxu0 0.0
  %9341 = vmatpush1.msra.mxu0 %v9336
  %9342 = vmatprep.subr.mxu0 0.0
  %9343 = vmatpush1.msra.mxu0 0.0
  %9344 = vmatprep.subr.mxu0 0.0
  %9345 = vmatpush1.msra.mxu0 0.0
  %9346 = vmatprep.subr.mxu0 0.0
  %9347 = vmatpush1.msra.mxu0 0.0
  %9348 = vmatprep.subr.mxu0 0.0
  %9349 = vmatpush1.msra.mxu0 0.0
  %9350 = vmatprep.subr.mxu0 0.0
  %9351 = vmatpush1.msra.mxu0 0.0
  %9352 = vmatprep.subr.mxu0 0.0
  %9353 = vmatpush1.msra.mxu0 0.0
  %9354 = vmatprep.subr.mxu0 0.0
  %9355 = vmatpush1.msra.mxu0 0.0
  %9356 = vmatprep.subr.mxu0 0.0
  %9357 = vmatpush1.msra.mxu0 0.0
  %9358 = vmatprep.subr.mxu0 0.0
  %9359 = vmatpush1.msra.mxu0 0.0
  %9360 = vmatprep.subr.mxu0 0.0
  %9361 = vmatpush1.msra.mxu0 0.0
  %9362 = vmatprep.subr.mxu0 0.0
  %9363 = vmatpush1.msra.mxu0 0.0
  %9364 = vmatprep.subr.mxu0 0.0
  %9365 = vmatpush1.msra.mxu0 0.0
  %9366 = vmatprep.subr.mxu0 0.0
  %9367 = vmatpush1.msra.mxu0 0.0
  %9368 = vmatprep.subr.mxu0 0.0
  %9369 = vmatpush1.msra.mxu0 0.0
  %9370 = vmatprep.subr.mxu0 0.0
  %9371 = vmatpush1.msra.mxu0 0.0
  %9372 = vmatprep.subr.mxu0 0.0
  %9373 = vmatpush1.msra.mxu0 0.0
  %9374 = vmatprep.subr.mxu0 0.0
  %9375 = vmatpush1.msra.mxu0 0.0
  %9376 = vmatprep.subr.mxu0 0.0
  %9377 = vmatpush1.msra.mxu0 0.0
  %9378 = vmatprep.subr.mxu0 0.0
  %9379 = vmatpush1.msra.mxu0 0.0
  %9380 = vmatprep.subr.mxu0 0.0
  %9381 = vmatpush1.msra.mxu0 0.0
  %9382 = vmatprep.subr.mxu0 0.0
  %9383 = vmatpush1.msra.mxu0 0.0
  %9384 = vmatprep.subr.mxu0 0.0
  %9385 = vmatpush1.msra.mxu0 0.0
  %9386 = vmatprep.subr.mxu0 0.0
  %9387 = vmatpush1.msra.mxu0 0.0
  %9388 = vmatprep.subr.mxu0 0.0
  %9389 = vmatpush1.msra.mxu0 0.0
  %9390 = vmatprep.subr.mxu0 0.0
  %9391 = vmatpush1.msra.mxu0 0.0
  %9392 = vmatprep.subr.mxu0 0.0
  %9393 = vmatpush1.msra.mxu0 0.0
  %9394 = vmatprep.subr.mxu0 0.0
  %9395 = vmatpush1.msra.mxu0 0.0
  %9396 = vmatprep.subr.mxu0 0.0
  %9397 = vmatpush1.msra.mxu0 0.0
  %9398 = vmatprep.subr.mxu0 0.0
  %9399 = vmatpush1.msra.mxu0 0.0
  %9400 = vmatprep.subr.mxu0 0.0
  %9401 = vmatpush1.msra.mxu0 0.0
  %9402 = vmatprep.mubr.f32.mxu0 0.0
  %9403 = vmatmul.mubr.f32.gmra.mrb[0].mxu0 %v9330
  %v9404 = vpop.f32.mrb[0].mxu0
  %v9405 = vadd.f32 0.0, %v9404
  %v9406 = vpop.f32.mrb[0].mxu0
  %9407 = vmatprep.mubr.f32.mxu0 0.0
  %9408 = vmatmul.mubr.f32.gmra.mrb[0].mxu0 %v9333
  %v9409 = vpop.f32.mrb[0].mxu0
  %v9410 = vadd.f32 0.0, %v9409
  %v9411 = vpop.f32.mrb[0].mxu0
  %9412 = vdwg.mxu0
  %v9414 = vsel %vm7622, %v8134, 0
  %v9417 = vsel %vm7622, %v8135, 0
  %v9420 = vsel %vm8158, %v4930, 0
  %9422 = vmatprep.subr.mxu0 0.0
  %9423 = vmatpush1.msra.mxu0 %v4925
  %9424 = vmatprep.subr.mxu0 0.0
  %9425 = vmatpush1.msra.mxu0 %v9420
  %9426 = vmatprep.subr.mxu0 0.0
  %9427 = vmatpush1.msra.mxu0 0.0
  %9428 = vmatprep.subr.mxu0 0.0
  %9429 = vmatpush1.msra.mxu0 0.0
  %9430 = vmatprep.subr.mxu0 0.0
  %9431 = vmatpush1.msra.mxu0 0.0
  %9432 = vmatprep.subr.mxu0 0.0
  %9433 = vmatpush1.msra.mxu0 0.0
  %9434 = vmatprep.subr.mxu0 0.0
  %9435 = vmatpush1.msra.mxu0 0.0
  %9436 = vmatprep.subr.mxu0 0.0
  %9437 = vmatpush1.msra.mxu0 0.0
  %9438 = vmatprep.subr.mxu0 0.0
  %9439 = vmatpush1.msra.mxu0 0.0
  %9440 = vmatprep.subr.mxu0 0.0
  %9441 = vmatpush1.msra.mxu0 0.0
  %9442 = vmatprep.subr.mxu0 0.0
  %9443 = vmatpush1.msra.mxu0 0.0
  %9444 = vmatprep.subr.mxu0 0.0
  %9445 = vmatpush1.msra.mxu0 0.0
  %9446 = vmatprep.subr.mxu0 0.0
  %9447 = vmatpush1.msra.mxu0 0.0
  %9448 = vmatprep.subr.mxu0 0.0
  %9449 = vmatpush1.msra.mxu0 0.0
  %9450 = vmatprep.subr.mxu0 0.0
  %9451 = vmatpush1.msra.mxu0 0.0
  %9452 = vmatprep.subr.mxu0 0.0
  %9453 = vmatpush1.msra.mxu0 0.0
  %9454 = vmatprep.subr.mxu0 0.0
  %9455 = vmatpush1.msra.mxu0 0.0
  %9456 = vmatprep.subr.mxu0 0.0
  %9457 = vmatpush1.msra.mxu0 0.0
  %9458 = vmatprep.subr.mxu0 0.0
  %9459 = vmatpush1.msra.mxu0 0.0
  %9460 = vmatprep.subr.mxu0 0.0
  %9461 = vmatpush1.msra.mxu0 0.0
  %9462 = vmatprep.subr.mxu0 0.0
  %9463 = vmatpush1.msra.mxu0 0.0
  %9464 = vmatprep.subr.mxu0 0.0
  %9465 = vmatpush1.msra.mxu0 0.0
  %9466 = vmatprep.subr.mxu0 0.0
  %9467 = vmatpush1.msra.mxu0 0.0
  %9468 = vmatprep.subr.mxu0 0.0
  %9469 = vmatpush1.msra.mxu0 0.0
  %9470 = vmatprep.subr.mxu0 0.0
  %9471 = vmatpush1.msra.mxu0 0.0
  %9472 = vmatprep.subr.mxu0 0.0
  %9473 = vmatpush1.msra.mxu0 0.0
  %9474 = vmatprep.subr.mxu0 0.0
  %9475 = vmatpush1.msra.mxu0 0.0
  %9476 = vmatprep.subr.mxu0 0.0
  %9477 = vmatpush1.msra.mxu0 0.0
  %9478 = vmatprep.subr.mxu0 0.0
  %9479 = vmatpush1.msra.mxu0 0.0
  %9480 = vmatprep.subr.mxu0 0.0
  %9481 = vmatpush1.msra.mxu0 0.0
  %9482 = vmatprep.subr.mxu0 0.0
  %9483 = vmatpush1.msra.mxu0 0.0
  %9484 = vmatprep.subr.mxu0 0.0
  %9485 = vmatpush1.msra.mxu0 0.0
  %9486 = vmatprep.mubr.f32.mxu0 0.0
  %9487 = vmatmul.mubr.f32.gmra.mrb[0].mxu0 %v9414
  %v9488 = vpop.f32.mrb[0].mxu0
  %v9489 = vadd.f32 0.0, %v9488
  %v9490 = vpop.f32.mrb[0].mxu0
  %9491 = vmatprep.mubr.f32.mxu0 0.0
  %9492 = vmatmul.mubr.f32.gmra.mrb[0].mxu0 %v9417
  %v9493 = vpop.f32.mrb[0].mxu0
  %v9494 = vadd.f32 0.0, %v9493
  %v9495 = vpop.f32.mrb[0].mxu0
  %9496 = vdwg.mxu0
  %v9498 = vsel %vm7622, %v8136, 0
  %v9501 = vsel %vm7622, %v8137, 0
  %v9504 = vsel %vm8158, %v5005, 0
  %9506 = vmatprep.subr.mxu0 0.0
  %9507 = vmatpush1.msra.mxu0 %v5000
  %9508 = vmatprep.subr.mxu0 0.0
  %9509 = vmatpush1.msra.mxu0 %v9504
  %9510 = vmatprep.subr.mxu0 0.0
  %9511 = vmatpush1.msra.mxu0 0.0
  %9512 = vmatprep.subr.mxu0 0.0
  %9513 = vmatpush1.msra.mxu0 0.0
  %9514 = vmatprep.subr.mxu0 0.0
  %9515 = vmatpush1.msra.mxu0 0.0
  %9516 = vmatprep.subr.mxu0 0.0
  %9517 = vmatpush1.msra.mxu0 0.0
  %9518 = vmatprep.subr.mxu0 0.0
  %9519 = vmatpush1.msra.mxu0 0.0
  %9520 = vmatprep.subr.mxu0 0.0
  %9521 = vmatpush1.msra.mxu0 0.0
  %9522 = vmatprep.subr.mxu0 0.0
  %9523 = vmatpush1.msra.mxu0 0.0
  %9524 = vmatprep.subr.mxu0 0.0
  %9525 = vmatpush1.msra.mxu0 0.0
  %9526 = vmatprep.subr.mxu0 0.0
  %9527 = vmatpush1.msra.mxu0 0.0
  %9528 = vmatprep.subr.mxu0 0.0
  %9529 = vmatpush1.msra.mxu0 0.0
  %9530 = vmatprep.subr.mxu0 0.0
  %9531 = vmatpush1.msra.mxu0 0.0
  %9532 = vmatprep.subr.mxu0 0.0
  %9533 = vmatpush1.msra.mxu0 0.0
  %9534 = vmatprep.subr.mxu0 0.0
  %9535 = vmatpush1.msra.mxu0 0.0
  %9536 = vmatprep.subr.mxu0 0.0
  %9537 = vmatpush1.msra.mxu0 0.0
  %9538 = vmatprep.subr.mxu0 0.0
  %9539 = vmatpush1.msra.mxu0 0.0
  %9540 = vmatprep.subr.mxu0 0.0
  %9541 = vmatpush1.msra.mxu0 0.0
  %9542 = vmatprep.subr.mxu0 0.0
  %9543 = vmatpush1.msra.mxu0 0.0
  %9544 = vmatprep.subr.mxu0 0.0
  %9545 = vmatpush1.msra.mxu0 0.0
  %9546 = vmatprep.subr.mxu0 0.0
  %9547 = vmatpush1.msra.mxu0 0.0
  %9548 = vmatprep.subr.mxu0 0.0
  %9549 = vmatpush1.msra.mxu0 0.0
  %9550 = vmatprep.subr.mxu0 0.0
  %9551 = vmatpush1.msra.mxu0 0.0
  %9552 = vmatprep.subr.mxu0 0.0
  %9553 = vmatpush1.msra.mxu0 0.0
  %9554 = vmatprep.subr.mxu0 0.0
  %9555 = vmatpush1.msra.mxu0 0.0
  %9556 = vmatprep.subr.mxu0 0.0
  %9557 = vmatpush1.msra.mxu0 0.0
  %9558 = vmatprep.subr.mxu0 0.0
  %9559 = vmatpush1.msra.mxu0 0.0
  %9560 = vmatprep.subr.mxu0 0.0
  %9561 = vmatpush1.msra.mxu0 0.0
  %9562 = vmatprep.subr.mxu0 0.0
  %9563 = vmatpush1.msra.mxu0 0.0
  %9564 = vmatprep.subr.mxu0 0.0
  %9565 = vmatpush1.msra.mxu0 0.0
  %9566 = vmatprep.subr.mxu0 0.0
  %9567 = vmatpush1.msra.mxu0 0.0
  %9568 = vmatprep.subr.mxu0 0.0
  %9569 = vmatpush1.msra.mxu0 0.0
  %9570 = vmatprep.mubr.f32.mxu0 0.0
  %9571 = vmatmul.mubr.f32.gmra.mrb[0].mxu0 %v9498
  %v9572 = vpop.f32.mrb[0].mxu0
  %v9573 = vadd.f32 0.0, %v9572
  %v9574 = vpop.f32.mrb[0].mxu0
  %9575 = vmatprep.mubr.f32.mxu0 0.0
  %9576 = vmatmul.mubr.f32.gmra.mrb[0].mxu0 %v9501
  %v9577 = vpop.f32.mrb[0].mxu0
  %v9578 = vadd.f32 0.0, %v9577
  %v9579 = vpop.f32.mrb[0].mxu0
  %9580 = vdwg.mxu0
  %v9582 = vsel %vm7622, %v8138, 0
  %v9585 = vsel %vm7622, %v8139, 0
  %v9588 = vsel %vm8158, %v5080, 0
  %9590 = vmatprep.subr.mxu0 0.0
  %9591 = vmatpush1.msra.mxu0 %v5075
  %9592 = vmatprep.subr.mxu0 0.0
  %9593 = vmatpush1.msra.mxu0 %v9588
  %9594 = vmatprep.subr.mxu0 0.0
  %9595 = vmatpush1.msra.mxu0 0.0
  %9596 = vmatprep.subr.mxu0 0.0
  %9597 = vmatpush1.msra.mxu0 0.0
  %9598 = vmatprep.subr.mxu0 0.0
  %9599 = vmatpush1.msra.mxu0 0.0
  %9600 = vmatprep.subr.mxu0 0.0
  %9601 = vmatpush1.msra.mxu0 0.0
  %9602 = vmatprep.subr.mxu0 0.0
  %9603 = vmatpush1.msra.mxu0 0.0
  %9604 = vmatprep.subr.mxu0 0.0
  %9605 = vmatpush1.msra.mxu0 0.0
  %9606 = vmatprep.subr.mxu0 0.0
  %9607 = vmatpush1.msra.mxu0 0.0
  %9608 = vmatprep.subr.mxu0 0.0
  %9609 = vmatpush1.msra.mxu0 0.0
  %9610 = vmatprep.subr.mxu0 0.0
  %9611 = vmatpush1.msra.mxu0 0.0
  %9612 = vmatprep.subr.mxu0 0.0
  %9613 = vmatpush1.msra.mxu0 0.0
  %9614 = vmatprep.subr.mxu0 0.0
  %9615 = vmatpush1.msra.mxu0 0.0
  %9616 = vmatprep.subr.mxu0 0.0
  %9617 = vmatpush1.msra.mxu0 0.0
  %9618 = vmatprep.subr.mxu0 0.0
  %9619 = vmatpush1.msra.mxu0 0.0
  %9620 = vmatprep.subr.mxu0 0.0
  %9621 = vmatpush1.msra.mxu0 0.0
  %9622 = vmatprep.subr.mxu0 0.0
  %9623 = vmatpush1.msra.mxu0 0.0
  %9624 = vmatprep.subr.mxu0 0.0
  %9625 = vmatpush1.msra.mxu0 0.0
  %9626 = vmatprep.subr.mxu0 0.0
  %9627 = vmatpush1.msra.mxu0 0.0
  %9628 = vmatprep.subr.mxu0 0.0
  %9629 = vmatpush1.msra.mxu0 0.0
  %9630 = vmatprep.subr.mxu0 0.0
  %9631 = vmatpush1.msra.mxu0 0.0
  %9632 = vmatprep.subr.mxu0 0.0
  %9633 = vmatpush1.msra.mxu0 0.0
  %9634 = vmatprep.subr.mxu0 0.0
  %9635 = vmatpush1.msra.mxu0 0.0
  %9636 = vmatprep.subr.mxu0 0.0
  %9637 = vmatpush1.msra.mxu0 0.0
  %9638 = vmatprep.subr.mxu0 0.0
  %9639 = vmatpush1.msra.mxu0 0.0
  %9640 = vmatprep.subr.mxu0 0.0
  %9641 = vmatpush1.msra.mxu0 0.0
  %9642 = vmatprep.subr.mxu0 0.0
  %9643 = vmatpush1.msra.mxu0 0.0
  %9644 = vmatprep.subr.mxu0 0.0
  %9645 = vmatpush1.msra.mxu0 0.0
  %9646 = vmatprep.subr.mxu0 0.0
  %9647 = vmatpush1.msra.mxu0 0.0
  %9648 = vmatprep.subr.mxu0 0.0
  %9649 = vmatpush1.msra.mxu0 0.0
  %9650 = vmatprep.subr.mxu0 0.0
  %9651 = vmatpush1.msra.mxu0 0.0
  %9652 = vmatprep.subr.mxu0 0.0
  %9653 = vmatpush1.msra.mxu0 0.0
  %9654 = vmatprep.mubr.f32.mxu0 0.0
  %9655 = vmatmul.mubr.f32.gmra.mrb[0].mxu0 %v9582
  %v9656 = vpop.f32.mrb[0].mxu0
  %v9657 = vadd.f32 0.0, %v9656
  %v9658 = vpop.f32.mrb[0].mxu0
  %9659 = vmatprep.mubr.f32.mxu0 0.0
  %9660 = vmatmul.mubr.f32.gmra.mrb[0].mxu0 %v9585
  %v9661 = vpop.f32.mrb[0].mxu0
  %v9662 = vadd.f32 0.0, %v9661
  %v9663 = vpop.f32.mrb[0].mxu0
  %9664 = vdwg.mxu0
  %v9666 = vsel %vm7622, %v8140, 0
  %v9669 = vsel %vm7622, %v8141, 0
  %v9672 = vsel %vm8158, %v5155, 0
  %9674 = vmatprep.subr.mxu0 0.0
  %9675 = vmatpush1.msra.mxu0 %v5150
  %9676 = vmatprep.subr.mxu0 0.0
  %9677 = vmatpush1.msra.mxu0 %v9672
  %9678 = vmatprep.subr.mxu0 0.0
  %9679 = vmatpush1.msra.mxu0 0.0
  %9680 = vmatprep.subr.mxu0 0.0
  %9681 = vmatpush1.msra.mxu0 0.0
  %9682 = vmatprep.subr.mxu0 0.0
  %9683 = vmatpush1.msra.mxu0 0.0
  %9684 = vmatprep.subr.mxu0 0.0
  %9685 = vmatpush1.msra.mxu0 0.0
  %9686 = vmatprep.subr.mxu0 0.0
  %9687 = vmatpush1.msra.mxu0 0.0
  %9688 = vmatprep.subr.mxu0 0.0
  %9689 = vmatpush1.msra.mxu0 0.0
  %9690 = vmatprep.subr.mxu0 0.0
  %9691 = vmatpush1.msra.mxu0 0.0
  %9692 = vmatprep.subr.mxu0 0.0
  %9693 = vmatpush1.msra.mxu0 0.0
  %9694 = vmatprep.subr.mxu0 0.0
  %9695 = vmatpush1.msra.mxu0 0.0
  %9696 = vmatprep.subr.mxu0 0.0
  %9697 = vmatpush1.msra.mxu0 0.0
  %9698 = vmatprep.subr.mxu0 0.0
  %9699 = vmatpush1.msra.mxu0 0.0
  %9700 = vmatprep.subr.mxu0 0.0
  %9701 = vmatpush1.msra.mxu0 0.0
  %9702 = vmatprep.subr.mxu0 0.0
  %9703 = vmatpush1.msra.mxu0 0.0
  %9704 = vmatprep.subr.mxu0 0.0
  %9705 = vmatpush1.msra.mxu0 0.0
  %9706 = vmatprep.subr.mxu0 0.0
  %9707 = vmatpush1.msra.mxu0 0.0
  %9708 = vmatprep.subr.mxu0 0.0
  %9709 = vmatpush1.msra.mxu0 0.0
  %9710 = vmatprep.subr.mxu0 0.0
  %9711 = vmatpush1.msra.mxu0 0.0
  %9712 = vmatprep.subr.mxu0 0.0
  %9713 = vmatpush1.msra.mxu0 0.0
  %9714 = vmatprep.subr.mxu0 0.0
  %9715 = vmatpush1.msra.mxu0 0.0
  %9716 = vmatprep.subr.mxu0 0.0
  %9717 = vmatpush1.msra.mxu0 0.0
  %9718 = vmatprep.subr.mxu0 0.0
  %9719 = vmatpush1.msra.mxu0 0.0
  %9720 = vmatprep.subr.mxu0 0.0
  %9721 = vmatpush1.msra.mxu0 0.0
  %9722 = vmatprep.subr.mxu0 0.0
  %9723 = vmatpush1.msra.mxu0 0.0
  %9724 = vmatprep.subr.mxu0 0.0
  %9725 = vmatpush1.msra.mxu0 0.0
  %9726 = vmatprep.subr.mxu0 0.0
  %9727 = vmatpush1.msra.mxu0 0.0
  %9728 = vmatprep.subr.mxu0 0.0
  %9729 = vmatpush1.msra.mxu0 0.0
  %9730 = vmatprep.subr.mxu0 0.0
  %9731 = vmatpush1.msra.mxu0 0.0
  %9732 = vmatprep.subr.mxu0 0.0
  %9733 = vmatpush1.msra.mxu0 0.0
  %9734 = vmatprep.subr.mxu0 0.0
  %9735 = vmatpush1.msra.mxu0 0.0
  %9736 = vmatprep.subr.mxu0 0.0
  %9737 = vmatpush1.msra.mxu0 0.0
  %9738 = vmatprep.mubr.f32.mxu0 0.0
  %9739 = vmatmul.mubr.f32.gmra.mrb[0].mxu0 %v9666
  %v9740 = vpop.f32.mrb[0].mxu0
  %v9741 = vadd.f32 0.0, %v9740
  %v9742 = vpop.f32.mrb[0].mxu0
  %9743 = vmatprep.mubr.f32.mxu0 0.0
  %9744 = vmatmul.mubr.f32.gmra.mrb[0].mxu0 %v9669
  %v9745 = vpop.f32.mrb[0].mxu0
  %v9746 = vadd.f32 0.0, %v9745
  %v9747 = vpop.f32.mrb[0].mxu0
  %9748 = vdwg.mxu0
  %v9750 = vsel %vm7622, %v8142, 0
  %v9753 = vsel %vm7622, %v8143, 0
  %v9756 = vsel %vm8158, %v5230, 0
  %9758 = vmatprep.subr.mxu0 0.0
  %9759 = vmatpush1.msra.mxu0 %v5225
  %9760 = vmatprep.subr.mxu0 0.0
  %9761 = vmatpush1.msra.mxu0 %v9756
  %9762 = vmatprep.subr.mxu0 0.0
  %9763 = vmatpush1.msra.mxu0 0.0
  %9764 = vmatprep.subr.mxu0 0.0
  %9765 = vmatpush1.msra.mxu0 0.0
  %9766 = vmatprep.subr.mxu0 0.0
  %9767 = vmatpush1.msra.mxu0 0.0
  %9768 = vmatprep.subr.mxu0 0.0
  %9769 = vmatpush1.msra.mxu0 0.0
  %9770 = vmatprep.subr.mxu0 0.0
  %9771 = vmatpush1.msra.mxu0 0.0
  %9772 = vmatprep.subr.mxu0 0.0
  %9773 = vmatpush1.msra.mxu0 0.0
  %9774 = vmatprep.subr.mxu0 0.0
  %9775 = vmatpush1.msra.mxu0 0.0
  %9776 = vmatprep.subr.mxu0 0.0
  %9777 = vmatpush1.msra.mxu0 0.0
  %9778 = vmatprep.subr.mxu0 0.0
  %9779 = vmatpush1.msra.mxu0 0.0
  %9780 = vmatprep.subr.mxu0 0.0
  %9781 = vmatpush1.msra.mxu0 0.0
  %9782 = vmatprep.subr.mxu0 0.0
  %9783 = vmatpush1.msra.mxu0 0.0
  %9784 = vmatprep.subr.mxu0 0.0
  %9785 = vmatpush1.msra.mxu0 0.0
  %9786 = vmatprep.subr.mxu0 0.0
  %9787 = vmatpush1.msra.mxu0 0.0
  %9788 = vmatprep.subr.mxu0 0.0
  %9789 = vmatpush1.msra.mxu0 0.0
  %9790 = vmatprep.subr.mxu0 0.0
  %9791 = vmatpush1.msra.mxu0 0.0
  %9792 = vmatprep.subr.mxu0 0.0
  %9793 = vmatpush1.msra.mxu0 0.0
  %9794 = vmatprep.subr.mxu0 0.0
  %9795 = vmatpush1.msra.mxu0 0.0
  %9796 = vmatprep.subr.mxu0 0.0
  %9797 = vmatpush1.msra.mxu0 0.0
  %9798 = vmatprep.subr.mxu0 0.0
  %9799 = vmatpush1.msra.mxu0 0.0
  %9800 = vmatprep.subr.mxu0 0.0
  %9801 = vmatpush1.msra.mxu0 0.0
  %9802 = vmatprep.subr.mxu0 0.0
  %9803 = vmatpush1.msra.mxu0 0.0
  %9804 = vmatprep.subr.mxu0 0.0
  %9805 = vmatpush1.msra.mxu0 0.0
  %9806 = vmatprep.subr.mxu0 0.0
  %9807 = vmatpush1.msra.mxu0 0.0
  %9808 = vmatprep.subr.mxu0 0.0
  %9809 = vmatpush1.msra.mxu0 0.0
  %9810 = vmatprep.subr.mxu0 0.0
  %9811 = vmatpush1.msra.mxu0 0.0
  %9812 = vmatprep.subr.mxu0 0.0
  %9813 = vmatpush1.msra.mxu0 0.0
  %9814 = vmatprep.subr.mxu0 0.0
  %9815 = vmatpush1.msra.mxu0 0.0
  %9816 = vmatprep.subr.mxu0 0.0
  %9817 = vmatpush1.msra.mxu0 0.0
  %9818 = vmatprep.subr.mxu0 0.0
  %9819 = vmatpush1.msra.mxu0 0.0
  %9820 = vmatprep.subr.mxu0 0.0
  %9821 = vmatpush1.msra.mxu0 0.0
  %9822 = vmatprep.mubr.f32.mxu0 0.0
  %9823 = vmatmul.mubr.f32.gmra.mrb[0].mxu0 %v9750
  %v9824 = vpop.f32.mrb[0].mxu0
  %v9825 = vadd.f32 0.0, %v9824
  %v9826 = vpop.f32.mrb[0].mxu0
  %9827 = vmatprep.mubr.f32.mxu0 0.0
  %9828 = vmatmul.mubr.f32.gmra.mrb[0].mxu0 %v9753
  %v9829 = vpop.f32.mrb[0].mxu0
  %v9830 = vadd.f32 0.0, %v9829
  %v9831 = vpop.f32.mrb[0].mxu0
  %9832 = vdwg.mxu0
  %v9834 = vsel %vm7622, %v8144, 0
  %v9837 = vsel %vm7622, %v8145, 0
  %v9840 = vsel %vm8158, %v5305, 0
  %9842 = vmatprep.subr.mxu0 0.0
  %9843 = vmatpush1.msra.mxu0 %v5300
  %9844 = vmatprep.subr.mxu0 0.0
  %9845 = vmatpush1.msra.mxu0 %v9840
  %9846 = vmatprep.subr.mxu0 0.0
  %9847 = vmatpush1.msra.mxu0 0.0
  %9848 = vmatprep.subr.mxu0 0.0
  %9849 = vmatpush1.msra.mxu0 0.0
  %9850 = vmatprep.subr.mxu0 0.0
  %9851 = vmatpush1.msra.mxu0 0.0
  %9852 = vmatprep.subr.mxu0 0.0
  %9853 = vmatpush1.msra.mxu0 0.0
  %9854 = vmatprep.subr.mxu0 0.0
  %9855 = vmatpush1.msra.mxu0 0.0
  %9856 = vmatprep.subr.mxu0 0.0
  %9857 = vmatpush1.msra.mxu0 0.0
  %9858 = vmatprep.subr.mxu0 0.0
  %9859 = vmatpush1.msra.mxu0 0.0
  %9860 = vmatprep.subr.mxu0 0.0
  %9861 = vmatpush1.msra.mxu0 0.0
  %9862 = vmatprep.subr.mxu0 0.0
  %9863 = vmatpush1.msra.mxu0 0.0
  %9864 = vmatprep.subr.mxu0 0.0
  %9865 = vmatpush1.msra.mxu0 0.0
  %9866 = vmatprep.subr.mxu0 0.0
  %9867 = vmatpush1.msra.mxu0 0.0
  %9868 = vmatprep.subr.mxu0 0.0
  %9869 = vmatpush1.msra.mxu0 0.0
  %9870 = vmatprep.subr.mxu0 0.0
  %9871 = vmatpush1.msra.mxu0 0.0
  %9872 = vmatprep.subr.mxu0 0.0
  %9873 = vmatpush1.msra.mxu0 0.0
  %9874 = vmatprep.subr.mxu0 0.0
  %9875 = vmatpush1.msra.mxu0 0.0
  %9876 = vmatprep.subr.mxu0 0.0
  %9877 = vmatpush1.msra.mxu0 0.0
  %9878 = vmatprep.subr.mxu0 0.0
  %9879 = vmatpush1.msra.mxu0 0.0
  %9880 = vmatprep.subr.mxu0 0.0
  %9881 = vmatpush1.msra.mxu0 0.0
  %9882 = vmatprep.subr.mxu0 0.0
  %9883 = vmatpush1.msra.mxu0 0.0
  %9884 = vmatprep.subr.mxu0 0.0
  %9885 = vmatpush1.msra.mxu0 0.0
  %9886 = vmatprep.subr.mxu0 0.0
  %9887 = vmatpush1.msra.mxu0 0.0
  %9888 = vmatprep.subr.mxu0 0.0
  %9889 = vmatpush1.msra.mxu0 0.0
  %9890 = vmatprep.subr.mxu0 0.0
  %9891 = vmatpush1.msra.mxu0 0.0
  %9892 = vmatprep.subr.mxu0 0.0
  %9893 = vmatpush1.msra.mxu0 0.0
  %9894 = vmatprep.subr.mxu0 0.0
  %9895 = vmatpush1.msra.mxu0 0.0
  %9896 = vmatprep.subr.mxu0 0.0
  %9897 = vmatpush1.msra.mxu0 0.0
  %9898 = vmatprep.subr.mxu0 0.0
  %9899 = vmatpush1.msra.mxu0 0.0
  %9900 = vmatprep.subr.mxu0 0.0
  %9901 = vmatpush1.msra.mxu0 0.0
  %9902 = vmatprep.subr.mxu0 0.0
  %9903 = vmatpush1.msra.mxu0 0.0
  %9904 = vmatprep.subr.mxu0 0.0
  %9905 = vmatpush1.msra.mxu0 0.0
  %9906 = vmatprep.mubr.f32.mxu0 0.0
  %9907 = vmatmul.mubr.f32.gmra.mrb[0].mxu0 %v9834
  %v9908 = vpop.f32.mrb[0].mxu0
  %v9909 = vadd.f32 0.0, %v9908
  %v9910 = vpop.f32.mrb[0].mxu0
  %9911 = vmatprep.mubr.f32.mxu0 0.0
  %9912 = vmatmul.mubr.f32.gmra.mrb[0].mxu0 %v9837
  %v9913 = vpop.f32.mrb[0].mxu0
  %v9914 = vadd.f32 0.0, %v9913
  %v9915 = vpop.f32.mrb[0].mxu0
  %9916 = vdwg.mxu0
  %v9918 = vsel %vm7622, %v8146, 0
  %v9921 = vsel %vm7622, %v8147, 0
  %v9924 = vsel %vm8158, %v5380, 0
  %9926 = vmatprep.subr.mxu0 0.0
  %9927 = vmatpush1.msra.mxu0 %v5375
  %9928 = vmatprep.subr.mxu0 0.0
  %9929 = vmatpush1.msra.mxu0 %v9924
  %9930 = vmatprep.subr.mxu0 0.0
  %9931 = vmatpush1.msra.mxu0 0.0
  %9932 = vmatprep.subr.mxu0 0.0
  %9933 = vmatpush1.msra.mxu0 0.0
  %9934 = vmatprep.subr.mxu0 0.0
  %9935 = vmatpush1.msra.mxu0 0.0
  %9936 = vmatprep.subr.mxu0 0.0
  %9937 = vmatpush1.msra.mxu0 0.0
  %9938 = vmatprep.subr.mxu0 0.0
  %9939 = vmatpush1.msra.mxu0 0.0
  %9940 = vmatprep.subr.mxu0 0.0
  %9941 = vmatpush1.msra.mxu0 0.0
  %9942 = vmatprep.subr.mxu0 0.0
  %9943 = vmatpush1.msra.mxu0 0.0
  %9944 = vmatprep.subr.mxu0 0.0
  %9945 = vmatpush1.msra.mxu0 0.0
  %9946 = vmatprep.subr.mxu0 0.0
  %9947 = vmatpush1.msra.mxu0 0.0
  %9948 = vmatprep.subr.mxu0 0.0
  %9949 = vmatpush1.msra.mxu0 0.0
  %9950 = vmatprep.subr.mxu0 0.0
  %9951 = vmatpush1.msra.mxu0 0.0
  %9952 = vmatprep.subr.mxu0 0.0
  %9953 = vmatpush1.msra.mxu0 0.0
  %9954 = vmatprep.subr.mxu0 0.0
  %9955 = vmatpush1.msra.mxu0 0.0
  %9956 = vmatprep.subr.mxu0 0.0
  %9957 = vmatpush1.msra.mxu0 0.0
  %9958 = vmatprep.subr.mxu0 0.0
  %9959 = vmatpush1.msra.mxu0 0.0
  %9960 = vmatprep.subr.mxu0 0.0
  %9961 = vmatpush1.msra.mxu0 0.0
  %9962 = vmatprep.subr.mxu0 0.0
  %9963 = vmatpush1.msra.mxu0 0.0
  %9964 = vmatprep.subr.mxu0 0.0
  %9965 = vmatpush1.msra.mxu0 0.0
  %9966 = vmatprep.subr.mxu0 0.0
  %9967 = vmatpush1.msra.mxu0 0.0
  %9968 = vmatprep.subr.mxu0 0.0
  %9969 = vmatpush1.msra.mxu0 0.0
  %9970 = vmatprep.subr.mxu0 0.0
  %9971 = vmatpush1.msra.mxu0 0.0
  %9972 = vmatprep.subr.mxu0 0.0
  %9973 = vmatpush1.msra.mxu0 0.0
  %9974 = vmatprep.subr.mxu0 0.0
  %9975 = vmatpush1.msra.mxu0 0.0
  %9976 = vmatprep.subr.mxu0 0.0
  %9977 = vmatpush1.msra.mxu0 0.0
  %9978 = vmatprep.subr.mxu0 0.0
  %9979 = vmatpush1.msra.mxu0 0.0
  %9980 = vmatprep.subr.mxu0 0.0
  %9981 = vmatpush1.msra.mxu0 0.0
  %9982 = vmatprep.subr.mxu0 0.0
  %9983 = vmatpush1.msra.mxu0 0.0
  %9984 = vmatprep.subr.mxu0 0.0
  %9985 = vmatpush1.msra.mxu0 0.0
  %9986 = vmatprep.subr.mxu0 0.0
  %9987 = vmatpush1.msra.mxu0 0.0
  %9988 = vmatprep.subr.mxu0 0.0
  %9989 = vmatpush1.msra.mxu0 0.0
  %9990 = vmatprep.mubr.f32.mxu0 0.0
  %9991 = vmatmul.mubr.f32.gmra.mrb[0].mxu0 %v9918
  %v9992 = vpop.f32.mrb[0].mxu0
  %v9993 = vadd.f32 0.0, %v9992
  %v9994 = vpop.f32.mrb[0].mxu0
  %9995 = vmatprep.mubr.f32.mxu0 0.0
  %9996 = vmatmul.mubr.f32.gmra.mrb[0].mxu0 %v9921
  %v9997 = vpop.f32.mrb[0].mxu0
  %v9998 = vadd.f32 0.0, %v9997
  %v9999 = vpop.f32.mrb[0].mxu0
  %10000 = vdwg.mxu0
  %v10002 = vsel %vm7622, %v8148, 0
  %v10005 = vsel %vm7622, %v8149, 0
  %v10008 = vsel %vm8158, %v5455, 0
  %10010 = vmatprep.subr.mxu0 0.0
  %10011 = vmatpush1.msra.mxu0 %v5450
  %10012 = vmatprep.subr.mxu0 0.0
  %10013 = vmatpush1.msra.mxu0 %v10008
  %10014 = vmatprep.subr.mxu0 0.0
  %10015 = vmatpush1.msra.mxu0 0.0
  %10016 = vmatprep.subr.mxu0 0.0
  %10017 = vmatpush1.msra.mxu0 0.0
  %10018 = vmatprep.subr.mxu0 0.0
  %10019 = vmatpush1.msra.mxu0 0.0
  %10020 = vmatprep.subr.mxu0 0.0
  %10021 = vmatpush1.msra.mxu0 0.0
  %10022 = vmatprep.subr.mxu0 0.0
  %10023 = vmatpush1.msra.mxu0 0.0
  %10024 = vmatprep.subr.mxu0 0.0
  %10025 = vmatpush1.msra.mxu0 0.0
  %10026 = vmatprep.subr.mxu0 0.0
  %10027 = vmatpush1.msra.mxu0 0.0
  %10028 = vmatprep.subr.mxu0 0.0
  %10029 = vmatpush1.msra.mxu0 0.0
  %10030 = vmatprep.subr.mxu0 0.0
  %10031 = vmatpush1.msra.mxu0 0.0
  %10032 = vmatprep.subr.mxu0 0.0
  %10033 = vmatpush1.msra.mxu0 0.0
  %10034 = vmatprep.subr.mxu0 0.0
  %10035 = vmatpush1.msra.mxu0 0.0
  %10036 = vmatprep.subr.mxu0 0.0
  %10037 = vmatpush1.msra.mxu0 0.0
  %10038 = vmatprep.subr.mxu0 0.0
  %10039 = vmatpush1.msra.mxu0 0.0
  %10040 = vmatprep.subr.mxu0 0.0
  %10041 = vmatpush1.msra.mxu0 0.0
  %10042 = vmatprep.subr.mxu0 0.0
  %10043 = vmatpush1.msra.mxu0 0.0
  %10044 = vmatprep.subr.mxu0 0.0
  %10045 = vmatpush1.msra.mxu0 0.0
  %10046 = vmatprep.subr.mxu0 0.0
  %10047 = vmatpush1.msra.mxu0 0.0
  %10048 = vmatprep.subr.mxu0 0.0
  %10049 = vmatpush1.msra.mxu0 0.0
  %10050 = vmatprep.subr.mxu0 0.0
  %10051 = vmatpush1.msra.mxu0 0.0
  %10052 = vmatprep.subr.mxu0 0.0
  %10053 = vmatpush1.msra.mxu0 0.0
  %10054 = vmatprep.subr.mxu0 0.0
  %10055 = vmatpush1.msra.mxu0 0.0
  %10056 = vmatprep.subr.mxu0 0.0
  %10057 = vmatpush1.msra.mxu0 0.0
  %10058 = vmatprep.subr.mxu0 0.0
  %10059 = vmatpush1.msra.mxu0 0.0
  %10060 = vmatprep.subr.mxu0 0.0
  %10061 = vmatpush1.msra.mxu0 0.0
  %10062 = vmatprep.subr.mxu0 0.0
  %10063 = vmatpush1.msra.mxu0 0.0
  %10064 = vmatprep.subr.mxu0 0.0
  %10065 = vmatpush1.msra.mxu0 0.0
  %10066 = vmatprep.subr.mxu0 0.0
  %10067 = vmatpush1.msra.mxu0 0.0
  %10068 = vmatprep.subr.mxu0 0.0
  %10069 = vmatpush1.msra.mxu0 0.0
  %10070 = vmatprep.subr.mxu0 0.0
  %10071 = vmatpush1.msra.mxu0 0.0
  %10072 = vmatprep.subr.mxu0 0.0
  %10073 = vmatpush1.msra.mxu0 0.0
  %10074 = vmatprep.mubr.f32.mxu0 0.0
  %10075 = vmatmul.mubr.f32.gmra.mrb[0].mxu0 %v10002
  %v10076 = vpop.f32.mrb[0].mxu0
  %v10077 = vadd.f32 0.0, %v10076
  %v10078 = vpop.f32.mrb[0].mxu0
  %10079 = vmatprep.mubr.f32.mxu0 0.0
  %10080 = vmatmul.mubr.f32.gmra.mrb[0].mxu0 %v10005
  %v10081 = vpop.f32.mrb[0].mxu0
  %v10082 = vadd.f32 0.0, %v10081
  %v10083 = vpop.f32.mrb[0].mxu0
  %10084 = vdwg.mxu0
  %v10086 = vsel %vm7622, %v8150, 0
  %v10089 = vsel %vm7622, %v8151, 0
  %v10092 = vsel %vm8158, %v5530, 0
  %10094 = vmatprep.subr.mxu0 0.0
  %10095 = vmatpush1.msra.mxu0 %v5525
  %10096 = vmatprep.subr.mxu0 0.0
  %10097 = vmatpush1.msra.mxu0 %v10092
  %10098 = vmatprep.subr.mxu0 0.0
  %10099 = vmatpush1.msra.mxu0 0.0
  %10100 = vmatprep.subr.mxu0 0.0
  %10101 = vmatpush1.msra.mxu0 0.0
  %10102 = vmatprep.subr.mxu0 0.0
  %10103 = vmatpush1.msra.mxu0 0.0
  %10104 = vmatprep.subr.mxu0 0.0
  %10105 = vmatpush1.msra.mxu0 0.0
  %10106 = vmatprep.subr.mxu0 0.0
  %10107 = vmatpush1.msra.mxu0 0.0
  %10108 = vmatprep.subr.mxu0 0.0
  %10109 = vmatpush1.msra.mxu0 0.0
  %10110 = vmatprep.subr.mxu0 0.0
  %10111 = vmatpush1.msra.mxu0 0.0
  %10112 = vmatprep.subr.mxu0 0.0
  %10113 = vmatpush1.msra.mxu0 0.0
  %10114 = vmatprep.subr.mxu0 0.0
  %10115 = vmatpush1.msra.mxu0 0.0
  %10116 = vmatprep.subr.mxu0 0.0
  %10117 = vmatpush1.msra.mxu0 0.0
  %10118 = vmatprep.subr.mxu0 0.0
  %10119 = vmatpush1.msra.mxu0 0.0
  %10120 = vmatprep.subr.mxu0 0.0
  %10121 = vmatpush1.msra.mxu0 0.0
  %10122 = vmatprep.subr.mxu0 0.0
  %10123 = vmatpush1.msra.mxu0 0.0
  %10124 = vmatprep.subr.mxu0 0.0
  %10125 = vmatpush1.msra.mxu0 0.0
  %10126 = vmatprep.subr.mxu0 0.0
  %10127 = vmatpush1.msra.mxu0 0.0
  %10128 = vmatprep.subr.mxu0 0.0
  %10129 = vmatpush1.msra.mxu0 0.0
  %10130 = vmatprep.subr.mxu0 0.0
  %10131 = vmatpush1.msra.mxu0 0.0
  %10132 = vmatprep.subr.mxu0 0.0
  %10133 = vmatpush1.msra.mxu0 0.0
  %10134 = vmatprep.subr.mxu0 0.0
  %10135 = vmatpush1.msra.mxu0 0.0
  %10136 = vmatprep.subr.mxu0 0.0
  %10137 = vmatpush1.msra.mxu0 0.0
  %10138 = vmatprep.subr.mxu0 0.0
  %10139 = vmatpush1.msra.mxu0 0.0
  %10140 = vmatprep.subr.mxu0 0.0
  %10141 = vmatpush1.msra.mxu0 0.0
  %10142 = vmatprep.subr.mxu0 0.0
  %10143 = vmatpush1.msra.mxu0 0.0
  %10144 = vmatprep.subr.mxu0 0.0
  %10145 = vmatpush1.msra.mxu0 0.0
  %10146 = vmatprep.subr.mxu0 0.0
  %10147 = vmatpush1.msra.mxu0 0.0
  %10148 = vmatprep.subr.mxu0 0.0
  %10149 = vmatpush1.msra.mxu0 0.0
  %10150 = vmatprep.subr.mxu0 0.0
  %10151 = vmatpush1.msra.mxu0 0.0
  %10152 = vmatprep.subr.mxu0 0.0
  %10153 = vmatpush1.msra.mxu0 0.0
  %10154 = vmatprep.subr.mxu0 0.0
  %10155 = vmatpush1.msra.mxu0 0.0
  %10156 = vmatprep.subr.mxu0 0.0
  %10157 = vmatpush1.msra.mxu0 0.0
  %10158 = vmatprep.mubr.f32.mxu0 0.0
  %10159 = vmatmul.mubr.f32.gmra.mrb[0].mxu0 %v10086
  %v10160 = vpop.f32.mrb[0].mxu0
  %v10161 = vadd.f32 0.0, %v10160
  %v10162 = vpop.f32.mrb[0].mxu0
  %10163 = vmatprep.mubr.f32.mxu0 0.0
  %10164 = vmatmul.mubr.f32.gmra.mrb[0].mxu0 %v10089
  %v10165 = vpop.f32.mrb[0].mxu0
  %v10166 = vadd.f32 0.0, %v10165
  %v10167 = vpop.f32.mrb[0].mxu0
  %10168 = vdwg.mxu0
  %v10170 = vsel %vm5533, %v8229, 0
  %v10173 = vsel %vm5533, %v8234, 0
  %10175 = vmatprep.subr.mxu0 0.0
  %10176 = vmatpush1.msra.mxu0 %v92
  %10177 = vmatprep.subr.mxu0 0.0
  %10178 = vmatpush1.msra.mxu0 0.0
  %10179 = vmatprep.subr.mxu0 0.0
  %10180 = vmatpush1.msra.mxu0 0.0
  %10181 = vmatprep.subr.mxu0 0.0
  %10182 = vmatpush1.msra.mxu0 0.0
  %10183 = vmatprep.subr.mxu0 0.0
  %10184 = vmatpush1.msra.mxu0 0.0
  %10185 = vmatprep.subr.mxu0 0.0
  %10186 = vmatpush1.msra.mxu0 0.0
  %10187 = vmatprep.subr.mxu0 0.0
  %10188 = vmatpush1.msra.mxu0 0.0
  %10189 = vmatprep.subr.mxu0 0.0
  %10190 = vmatpush1.msra.mxu0 0.0
  %10191 = vmatprep.subr.mxu0 0.0
  %10192 = vmatpush1.msra.mxu0 0.0
  %10193 = vmatprep.subr.mxu0 0.0
  %10194 = vmatpush1.msra.mxu0 0.0
  %10195 = vmatprep.subr.mxu0 0.0
  %10196 = vmatpush1.msra.mxu0 0.0
  %10197 = vmatprep.subr.mxu0 0.0
  %10198 = vmatpush1.msra.mxu0 0.0
  %10199 = vmatprep.subr.mxu0 0.0
  %10200 = vmatpush1.msra.mxu0 0.0
  %10201 = vmatprep.subr.mxu0 0.0
  %10202 = vmatpush1.msra.mxu0 0.0
  %10203 = vmatprep.subr.mxu0 0.0
  %10204 = vmatpush1.msra.mxu0 0.0
  %10205 = vmatprep.subr.mxu0 0.0
  %10206 = vmatpush1.msra.mxu0 0.0
  %10207 = vmatprep.subr.mxu0 0.0
  %10208 = vmatpush1.msra.mxu0 0.0
  %10209 = vmatprep.subr.mxu0 0.0
  %10210 = vmatpush1.msra.mxu0 0.0
  %10211 = vmatprep.subr.mxu0 0.0
  %10212 = vmatpush1.msra.mxu0 0.0
  %10213 = vmatprep.subr.mxu0 0.0
  %10214 = vmatpush1.msra.mxu0 0.0
  %10215 = vmatprep.subr.mxu0 0.0
  %10216 = vmatpush1.msra.mxu0 0.0
  %10217 = vmatprep.subr.mxu0 0.0
  %10218 = vmatpush1.msra.mxu0 0.0
  %10219 = vmatprep.subr.mxu0 0.0
  %10220 = vmatpush1.msra.mxu0 0.0
  %10221 = vmatprep.subr.mxu0 0.0
  %10222 = vmatpush1.msra.mxu0 0.0
  %10223 = vmatprep.subr.mxu0 0.0
  %10224 = vmatpush1.msra.mxu0 0.0
  %10225 = vmatprep.subr.mxu0 0.0
  %10226 = vmatpush1.msra.mxu0 0.0
  %10227 = vmatprep.subr.mxu0 0.0
  %10228 = vmatpush1.msra.mxu0 0.0
  %10229 = vmatprep.subr.mxu0 0.0
  %10230 = vmatpush1.msra.mxu0 0.0
  %10231 = vmatprep.subr.mxu0 0.0
  %10232 = vmatpush1.msra.mxu0 0.0
  %10233 = vmatprep.subr.mxu0 0.0
  %10234 = vmatpush1.msra.mxu0 0.0
  %10235 = vmatprep.subr.mxu0 0.0
  %10236 = vmatpush1.msra.mxu0 0.0
  %10237 = vmatprep.subr.mxu0 0.0
  %10238 = vmatpush1.msra.mxu0 0.0
  %10239 = vmatprep.mubr.f32.mxu0 0.0
  %10240 = vmatmul.mubr.f32.gmra.mrb[0].mxu0 %v10170
  %v10241 = vpop.f32.mrb[0].mxu0
  %v10242 = vadd.f32 0.0, %v10241
  %v10243 = vpop.f32.mrb[0].mxu0
  %10244 = vmatprep.mubr.f32.mxu0 0.0
  %10245 = vmatmul.mubr.f32.gmra.mrb[0].mxu0 %v10173
  %v10246 = vpop.f32.mrb[0].mxu0
  %v10247 = vadd.f32 0.0, %v10246
  %v10248 = vpop.f32.mrb[0].mxu0
  %10249 = vdwg.mxu0
  %v10251 = vsel %vm5533, %v8313, 0
  %v10254 = vsel %vm5533, %v8318, 0
  %10256 = vmatprep.subr.mxu0 0.0
  %10257 = vmatpush1.msra.mxu0 %v92
  %10258 = vmatprep.subr.mxu0 0.0
  %10259 = vmatpush1.msra.mxu0 0.0
  %10260 = vmatprep.subr.mxu0 0.0
  %10261 = vmatpush1.msra.mxu0 0.0
  %10262 = vmatprep.subr.mxu0 0.0
  %10263 = vmatpush1.msra.mxu0 0.0
  %10264 = vmatprep.subr.mxu0 0.0
  %10265 = vmatpush1.msra.mxu0 0.0
  %10266 = vmatprep.subr.mxu0 0.0
  %10267 = vmatpush1.msra.mxu0 0.0
  %10268 = vmatprep.subr.mxu0 0.0
  %10269 = vmatpush1.msra.mxu0 0.0
  %10270 = vmatprep.subr.mxu0 0.0
  %10271 = vmatpush1.msra.mxu0 0.0
  %10272 = vmatprep.subr.mxu0 0.0
  %10273 = vmatpush1.msra.mxu0 0.0
  %10274 = vmatprep.subr.mxu0 0.0
  %10275 = vmatpush1.msra.mxu0 0.0
  %10276 = vmatprep.subr.mxu0 0.0
  %10277 = vmatpush1.msra.mxu0 0.0
  %10278 = vmatprep.subr.mxu0 0.0
  %10279 = vmatpush1.msra.mxu0 0.0
  %10280 = vmatprep.subr.mxu0 0.0
  %10281 = vmatpush1.msra.mxu0 0.0
  %10282 = vmatprep.subr.mxu0 0.0
  %10283 = vmatpush1.msra.mxu0 0.0
  %10284 = vmatprep.subr.mxu0 0.0
  %10285 = vmatpush1.msra.mxu0 0.0
  %10286 = vmatprep.subr.mxu0 0.0
  %10287 = vmatpush1.msra.mxu0 0.0
  %10288 = vmatprep.subr.mxu0 0.0
  %10289 = vmatpush1.msra.mxu0 0.0
  %10290 = vmatprep.subr.mxu0 0.0
  %10291 = vmatpush1.msra.mxu0 0.0
  %10292 = vmatprep.subr.mxu0 0.0
  %10293 = vmatpush1.msra.mxu0 0.0
  %10294 = vmatprep.subr.mxu0 0.0
  %10295 = vmatpush1.msra.mxu0 0.0
  %10296 = vmatprep.subr.mxu0 0.0
  %10297 = vmatpush1.msra.mxu0 0.0
  %10298 = vmatprep.subr.mxu0 0.0
  %10299 = vmatpush1.msra.mxu0 0.0
  %10300 = vmatprep.subr.mxu0 0.0
  %10301 = vmatpush1.msra.mxu0 0.0
  %10302 = vmatprep.subr.mxu0 0.0
  %10303 = vmatpush1.msra.mxu0 0.0
  %10304 = vmatprep.subr.mxu0 0.0
  %10305 = vmatpush1.msra.mxu0 0.0
  %10306 = vmatprep.subr.mxu0 0.0
  %10307 = vmatpush1.msra.mxu0 0.0
  %10308 = vmatprep.subr.mxu0 0.0
  %10309 = vmatpush1.msra.mxu0 0.0
  %10310 = vmatprep.subr.mxu0 0.0
  %10311 = vmatpush1.msra.mxu0 0.0
  %10312 = vmatprep.subr.mxu0 0.0
  %10313 = vmatpush1.msra.mxu0 0.0
  %10314 = vmatprep.subr.mxu0 0.0
  %10315 = vmatpush1.msra.mxu0 0.0
  %10316 = vmatprep.subr.mxu0 0.0
  %10317 = vmatpush1.msra.mxu0 0.0
  %10318 = vmatprep.subr.mxu0 0.0
  %10319 = vmatpush1.msra.mxu0 0.0
  %10320 = vmatprep.mubr.f32.mxu0 0.0
  %10321 = vmatmul.mubr.f32.gmra.mrb[0].mxu0 %v10251
  %v10322 = vpop.f32.mrb[0].mxu0
  %v10323 = vadd.f32 0.0, %v10322
  %v10324 = vpop.f32.mrb[0].mxu0
  %10325 = vmatprep.mubr.f32.mxu0 0.0
  %10326 = vmatmul.mubr.f32.gmra.mrb[0].mxu0 %v10254
  %v10327 = vpop.f32.mrb[0].mxu0
  %v10328 = vadd.f32 0.0, %v10327
  %v10329 = vpop.f32.mrb[0].mxu0
  %10330 = vdwg.mxu0
  %v10332 = vsel %vm5533, %v8397, 0
  %v10335 = vsel %vm5533, %v8402, 0
  %10337 = vmatprep.subr.mxu0 0.0
  %10338 = vmatpush1.msra.mxu0 %v92
  %10339 = vmatprep.subr.mxu0 0.0
  %10340 = vmatpush1.msra.mxu0 0.0
  %10341 = vmatprep.subr.mxu0 0.0
  %10342 = vmatpush1.msra.mxu0 0.0
  %10343 = vmatprep.subr.mxu0 0.0
  %10344 = vmatpush1.msra.mxu0 0.0
  %10345 = vmatprep.subr.mxu0 0.0
  %10346 = vmatpush1.msra.mxu0 0.0
  %10347 = vmatprep.subr.mxu0 0.0
  %10348 = vmatpush1.msra.mxu0 0.0
  %10349 = vmatprep.subr.mxu0 0.0
  %10350 = vmatpush1.msra.mxu0 0.0
  %10351 = vmatprep.subr.mxu0 0.0
  %10352 = vmatpush1.msra.mxu0 0.0
  %10353 = vmatprep.subr.mxu0 0.0
  %10354 = vmatpush1.msra.mxu0 0.0
  %10355 = vmatprep.subr.mxu0 0.0
  %10356 = vmatpush1.msra.mxu0 0.0
  %10357 = vmatprep.subr.mxu0 0.0
  %10358 = vmatpush1.msra.mxu0 0.0
  %10359 = vmatprep.subr.mxu0 0.0
  %10360 = vmatpush1.msra.mxu0 0.0
  %10361 = vmatprep.subr.mxu0 0.0
  %10362 = vmatpush1.msra.mxu0 0.0
  %10363 = vmatprep.subr.mxu0 0.0
  %10364 = vmatpush1.msra.mxu0 0.0
  %10365 = vmatprep.subr.mxu0 0.0
  %10366 = vmatpush1.msra.mxu0 0.0
  %10367 = vmatprep.subr.mxu0 0.0
  %10368 = vmatpush1.msra.mxu0 0.0
  %10369 = vmatprep.subr.mxu0 0.0
  %10370 = vmatpush1.msra.mxu0 0.0
  %10371 = vmatprep.subr.mxu0 0.0
  %10372 = vmatpush1.msra.mxu0 0.0
  %10373 = vmatprep.subr.mxu0 0.0
  %10374 = vmatpush1.msra.mxu0 0.0
  %10375 = vmatprep.subr.mxu0 0.0
  %10376 = vmatpush1.msra.mxu0 0.0
  %10377 = vmatprep.subr.mxu0 0.0
  %10378 = vmatpush1.msra.mxu0 0.0
  %10379 = vmatprep.subr.mxu0 0.0
  %10380 = vmatpush1.msra.mxu0 0.0
  %10381 = vmatprep.subr.mxu0 0.0
  %10382 = vmatpush1.msra.mxu0 0.0
  %10383 = vmatprep.subr.mxu0 0.0
  %10384 = vmatpush1.msra.mxu0 0.0
  %10385 = vmatprep.subr.mxu0 0.0
  %10386 = vmatpush1.msra.mxu0 0.0
  %10387 = vmatprep.subr.mxu0 0.0
  %10388 = vmatpush1.msra.mxu0 0.0
  %10389 = vmatprep.subr.mxu0 0.0
  %10390 = vmatpush1.msra.mxu0 0.0
  %10391 = vmatprep.subr.mxu0 0.0
  %10392 = vmatpush1.msra.mxu0 0.0
  %10393 = vmatprep.subr.mxu0 0.0
  %10394 = vmatpush1.msra.mxu0 0.0
  %10395 = vmatprep.subr.mxu0 0.0
  %10396 = vmatpush1.msra.mxu0 0.0
  %10397 = vmatprep.subr.mxu0 0.0
  %10398 = vmatpush1.msra.mxu0 0.0
  %10399 = vmatprep.subr.mxu0 0.0
  %10400 = vmatpush1.msra.mxu0 0.0
  %10401 = vmatprep.mubr.f32.mxu0 0.0
  %10402 = vmatmul.mubr.f32.gmra.mrb[0].mxu0 %v10332
  %v10403 = vpop.f32.mrb[0].mxu0
  %v10404 = vadd.f32 0.0, %v10403
  %v10405 = vpop.f32.mrb[0].mxu0
  %10406 = vmatprep.mubr.f32.mxu0 0.0
  %10407 = vmatmul.mubr.f32.gmra.mrb[0].mxu0 %v10335
  %v10408 = vpop.f32.mrb[0].mxu0
  %v10409 = vadd.f32 0.0, %v10408
  %v10410 = vpop.f32.mrb[0].mxu0
  %10411 = vdwg.mxu0
  %v10413 = vsel %vm5533, %v8481, 0
  %v10416 = vsel %vm5533, %v8486, 0
  %10418 = vmatprep.subr.mxu0 0.0
  %10419 = vmatpush1.msra.mxu0 %v92
  %10420 = vmatprep.subr.mxu0 0.0
  %10421 = vmatpush1.msra.mxu0 0.0
  %10422 = vmatprep.subr.mxu0 0.0
  %10423 = vmatpush1.msra.mxu0 0.0
  %10424 = vmatprep.subr.mxu0 0.0
  %10425 = vmatpush1.msra.mxu0 0.0
  %10426 = vmatprep.subr.mxu0 0.0
  %10427 = vmatpush1.msra.mxu0 0.0
  %10428 = vmatprep.subr.mxu0 0.0
  %10429 = vmatpush1.msra.mxu0 0.0
  %10430 = vmatprep.subr.mxu0 0.0
  %10431 = vmatpush1.msra.mxu0 0.0
  %10432 = vmatprep.subr.mxu0 0.0
  %10433 = vmatpush1.msra.mxu0 0.0
  %10434 = vmatprep.subr.mxu0 0.0
  %10435 = vmatpush1.msra.mxu0 0.0
  %10436 = vmatprep.subr.mxu0 0.0
  %10437 = vmatpush1.msra.mxu0 0.0
  %10438 = vmatprep.subr.mxu0 0.0
  %10439 = vmatpush1.msra.mxu0 0.0
  %10440 = vmatprep.subr.mxu0 0.0
  %10441 = vmatpush1.msra.mxu0 0.0
  %10442 = vmatprep.subr.mxu0 0.0
  %10443 = vmatpush1.msra.mxu0 0.0
  %10444 = vmatprep.subr.mxu0 0.0
  %10445 = vmatpush1.msra.mxu0 0.0
  %10446 = vmatprep.subr.mxu0 0.0
  %10447 = vmatpush1.msra.mxu0 0.0
  %10448 = vmatprep.subr.mxu0 0.0
  %10449 = vmatpush1.msra.mxu0 0.0
  %10450 = vmatprep.subr.mxu0 0.0
  %10451 = vmatpush1.msra.mxu0 0.0
  %10452 = vmatprep.subr.mxu0 0.0
  %10453 = vmatpush1.msra.mxu0 0.0
  %10454 = vmatprep.subr.mxu0 0.0
  %10455 = vmatpush1.msra.mxu0 0.0
  %10456 = vmatprep.subr.mxu0 0.0
  %10457 = vmatpush1.msra.mxu0 0.0
  %10458 = vmatprep.subr.mxu0 0.0
  %10459 = vmatpush1.msra.mxu0 0.0
  %10460 = vmatprep.subr.mxu0 0.0
  %10461 = vmatpush1.msra.mxu0 0.0
  %10462 = vmatprep.subr.mxu0 0.0
  %10463 = vmatpush1.msra.mxu0 0.0
  %10464 = vmatprep.subr.mxu0 0.0
  %10465 = vmatpush1.msra.mxu0 0.0
  %10466 = vmatprep.subr.mxu0 0.0
  %10467 = vmatpush1.msra.mxu0 0.0
  %10468 = vmatprep.subr.mxu0 0.0
  %10469 = vmatpush1.msra.mxu0 0.0
  %10470 = vmatprep.subr.mxu0 0.0
  %10471 = vmatpush1.msra.mxu0 0.0
  %10472 = vmatprep.subr.mxu0 0.0
  %10473 = vmatpush1.msra.mxu0 0.0
  %10474 = vmatprep.subr.mxu0 0.0
  %10475 = vmatpush1.msra.mxu0 0.0
  %10476 = vmatprep.subr.mxu0 0.0
  %10477 = vmatpush1.msra.mxu0 0.0
  %10478 = vmatprep.subr.mxu0 0.0
  %10479 = vmatpush1.msra.mxu0 0.0
  %10480 = vmatprep.subr.mxu0 0.0
  %10481 = vmatpush1.msra.mxu0 0.0
  %10482 = vmatprep.mubr.f32.mxu0 0.0
  %10483 = vmatmul.mubr.f32.gmra.mrb[0].mxu0 %v10413
  %v10484 = vpop.f32.mrb[0].mxu0
  %v10485 = vadd.f32 0.0, %v10484
  %v10486 = vpop.f32.mrb[0].mxu0
  %10487 = vmatprep.mubr.f32.mxu0 0.0
  %10488 = vmatmul.mubr.f32.gmra.mrb[0].mxu0 %v10416
  %v10489 = vpop.f32.mrb[0].mxu0
  %v10490 = vadd.f32 0.0, %v10489
  %v10491 = vpop.f32.mrb[0].mxu0
  %10492 = vdwg.mxu0
  %v10494 = vsel %vm5533, %v8565, 0
  %v10497 = vsel %vm5533, %v8570, 0
  %10499 = vmatprep.subr.mxu0 0.0
  %10500 = vmatpush1.msra.mxu0 %v92
  %10501 = vmatprep.subr.mxu0 0.0
  %10502 = vmatpush1.msra.mxu0 0.0
  %10503 = vmatprep.subr.mxu0 0.0
  %10504 = vmatpush1.msra.mxu0 0.0
  %10505 = vmatprep.subr.mxu0 0.0
  %10506 = vmatpush1.msra.mxu0 0.0
  %10507 = vmatprep.subr.mxu0 0.0
  %10508 = vmatpush1.msra.mxu0 0.0
  %10509 = vmatprep.subr.mxu0 0.0
  %10510 = vmatpush1.msra.mxu0 0.0
  %10511 = vmatprep.subr.mxu0 0.0
  %10512 = vmatpush1.msra.mxu0 0.0
  %10513 = vmatprep.subr.mxu0 0.0
  %10514 = vmatpush1.msra.mxu0 0.0
  %10515 = vmatprep.subr.mxu0 0.0
  %10516 = vmatpush1.msra.mxu0 0.0
  %10517 = vmatprep.subr.mxu0 0.0
  %10518 = vmatpush1.msra.mxu0 0.0
  %10519 = vmatprep.subr.mxu0 0.0
  %10520 = vmatpush1.msra.mxu0 0.0
  %10521 = vmatprep.subr.mxu0 0.0
  %10522 = vmatpush1.msra.mxu0 0.0
  %10523 = vmatprep.subr.mxu0 0.0
  %10524 = vmatpush1.msra.mxu0 0.0
  %10525 = vmatprep.subr.mxu0 0.0
  %10526 = vmatpush1.msra.mxu0 0.0
  %10527 = vmatprep.subr.mxu0 0.0
  %10528 = vmatpush1.msra.mxu0 0.0
  %10529 = vmatprep.subr.mxu0 0.0
  %10530 = vmatpush1.msra.mxu0 0.0
  %10531 = vmatprep.subr.mxu0 0.0
  %10532 = vmatpush1.msra.mxu0 0.0
  %10533 = vmatprep.subr.mxu0 0.0
  %10534 = vmatpush1.msra.mxu0 0.0
  %10535 = vmatprep.subr.mxu0 0.0
  %10536 = vmatpush1.msra.mxu0 0.0
  %10537 = vmatprep.subr.mxu0 0.0
  %10538 = vmatpush1.msra.mxu0 0.0
  %10539 = vmatprep.subr.mxu0 0.0
  %10540 = vmatpush1.msra.mxu0 0.0
  %10541 = vmatprep.subr.mxu0 0.0
  %10542 = vmatpush1.msra.mxu0 0.0
  %10543 = vmatprep.subr.mxu0 0.0
  %10544 = vmatpush1.msra.mxu0 0.0
  %10545 = vmatprep.subr.mxu0 0.0
  %10546 = vmatpush1.msra.mxu0 0.0
  %10547 = vmatprep.subr.mxu0 0.0
  %10548 = vmatpush1.msra.mxu0 0.0
  %10549 = vmatprep.subr.mxu0 0.0
  %10550 = vmatpush1.msra.mxu0 0.0
  %10551 = vmatprep.subr.mxu0 0.0
  %10552 = vmatpush1.msra.mxu0 0.0
  %10553 = vmatprep.subr.mxu0 0.0
  %10554 = vmatpush1.msra.mxu0 0.0
  %10555 = vmatprep.subr.mxu0 0.0
  %10556 = vmatpush1.msra.mxu0 0.0
  %10557 = vmatprep.subr.mxu0 0.0
  %10558 = vmatpush1.msra.mxu0 0.0
  %10559 = vmatprep.subr.mxu0 0.0
  %10560 = vmatpush1.msra.mxu0 0.0
  %10561 = vmatprep.subr.mxu0 0.0
  %10562 = vmatpush1.msra.mxu0 0.0
  %10563 = vmatprep.mubr.f32.mxu0 0.0
  %10564 = vmatmul.mubr.f32.gmra.mrb[0].mxu0 %v10494
  %v10565 = vpop.f32.mrb[0].mxu0
  %v10566 = vadd.f32 0.0, %v10565
  %v10567 = vpop.f32.mrb[0].mxu0
  %10568 = vmatprep.mubr.f32.mxu0 0.0
  %10569 = vmatmul.mubr.f32.gmra.mrb[0].mxu0 %v10497
  %v10570 = vpop.f32.mrb[0].mxu0
  %v10571 = vadd.f32 0.0, %v10570
  %v10572 = vpop.f32.mrb[0].mxu0
  %10573 = vdwg.mxu0
  %v10575 = vsel %vm5533, %v8649, 0
  %v10578 = vsel %vm5533, %v8654, 0
  %10580 = vmatprep.subr.mxu0 0.0
  %10581 = vmatpush1.msra.mxu0 %v92
  %10582 = vmatprep.subr.mxu0 0.0
  %10583 = vmatpush1.msra.mxu0 0.0
  %10584 = vmatprep.subr.mxu0 0.0
  %10585 = vmatpush1.msra.mxu0 0.0
  %10586 = vmatprep.subr.mxu0 0.0
  %10587 = vmatpush1.msra.mxu0 0.0
  %10588 = vmatprep.subr.mxu0 0.0
  %10589 = vmatpush1.msra.mxu0 0.0
  %10590 = vmatprep.subr.mxu0 0.0
  %10591 = vmatpush1.msra.mxu0 0.0
  %10592 = vmatprep.subr.mxu0 0.0
  %10593 = vmatpush1.msra.mxu0 0.0
  %10594 = vmatprep.subr.mxu0 0.0
  %10595 = vmatpush1.msra.mxu0 0.0
  %10596 = vmatprep.subr.mxu0 0.0
  %10597 = vmatpush1.msra.mxu0 0.0
  %10598 = vmatprep.subr.mxu0 0.0
  %10599 = vmatpush1.msra.mxu0 0.0
  %10600 = vmatprep.subr.mxu0 0.0
  %10601 = vmatpush1.msra.mxu0 0.0
  %10602 = vmatprep.subr.mxu0 0.0
  %10603 = vmatpush1.msra.mxu0 0.0
  %10604 = vmatprep.subr.mxu0 0.0
  %10605 = vmatpush1.msra.mxu0 0.0
  %10606 = vmatprep.subr.mxu0 0.0
  %10607 = vmatpush1.msra.mxu0 0.0
  %10608 = vmatprep.subr.mxu0 0.0
  %10609 = vmatpush1.msra.mxu0 0.0
  %10610 = vmatprep.subr.mxu0 0.0
  %10611 = vmatpush1.msra.mxu0 0.0
  %10612 = vmatprep.subr.mxu0 0.0
  %10613 = vmatpush1.msra.mxu0 0.0
  %10614 = vmatprep.subr.mxu0 0.0
  %10615 = vmatpush1.msra.mxu0 0.0
  %10616 = vmatprep.subr.mxu0 0.0
  %10617 = vmatpush1.msra.mxu0 0.0
  %10618 = vmatprep.subr.mxu0 0.0
  %10619 = vmatpush1.msra.mxu0 0.0
  %10620 = vmatprep.subr.mxu0 0.0
  %10621 = vmatpush1.msra.mxu0 0.0
  %10622 = vmatprep.subr.mxu0 0.0
  %10623 = vmatpush1.msra.mxu0 0.0
  %10624 = vmatprep.subr.mxu0 0.0
  %10625 = vmatpush1.msra.mxu0 0.0
  %10626 = vmatprep.subr.mxu0 0.0
  %10627 = vmatpush1.msra.mxu0 0.0
  %10628 = vmatprep.subr.mxu0 0.0
  %10629 = vmatpush1.msra.mxu0 0.0
  %10630 = vmatprep.subr.mxu0 0.0
  %10631 = vmatpush1.msra.mxu0 0.0
  %10632 = vmatprep.subr.mxu0 0.0
  %10633 = vmatpush1.msra.mxu0 0.0
  %10634 = vmatprep.subr.mxu0 0.0
  %10635 = vmatpush1.msra.mxu0 0.0
  %10636 = vmatprep.subr.mxu0 0.0
  %10637 = vmatpush1.msra.mxu0 0.0
  %10638 = vmatprep.subr.mxu0 0.0
  %10639 = vmatpush1.msra.mxu0 0.0
  %10640 = vmatprep.subr.mxu0 0.0
  %10641 = vmatpush1.msra.mxu0 0.0
  %10642 = vmatprep.subr.mxu0 0.0
  %10643 = vmatpush1.msra.mxu0 0.0
  %10644 = vmatprep.mubr.f32.mxu0 0.0
  %10645 = vmatmul.mubr.f32.gmra.mrb[0].mxu0 %v10575
  %v10646 = vpop.f32.mrb[0].mxu0
  %v10647 = vadd.f32 0.0, %v10646
  %v10648 = vpop.f32.mrb[0].mxu0
  %10649 = vmatprep.mubr.f32.mxu0 0.0
  %10650 = vmatmul.mubr.f32.gmra.mrb[0].mxu0 %v10578
  %v10651 = vpop.f32.mrb[0].mxu0
  %v10652 = vadd.f32 0.0, %v10651
  %v10653 = vpop.f32.mrb[0].mxu0
  %10654 = vdwg.mxu0
  %v10656 = vsel %vm5533, %v8733, 0
  %v10659 = vsel %vm5533, %v8738, 0
  %10661 = vmatprep.subr.mxu0 0.0
  %10662 = vmatpush1.msra.mxu0 %v93
  %10663 = vmatprep.subr.mxu0 0.0
  %10664 = vmatpush1.msra.mxu0 0.0
  %10665 = vmatprep.subr.mxu0 0.0
  %10666 = vmatpush1.msra.mxu0 0.0
  %10667 = vmatprep.subr.mxu0 0.0
  %10668 = vmatpush1.msra.mxu0 0.0
  %10669 = vmatprep.subr.mxu0 0.0
  %10670 = vmatpush1.msra.mxu0 0.0
  %10671 = vmatprep.subr.mxu0 0.0
  %10672 = vmatpush1.msra.mxu0 0.0
  %10673 = vmatprep.subr.mxu0 0.0
  %10674 = vmatpush1.msra.mxu0 0.0
  %10675 = vmatprep.subr.mxu0 0.0
  %10676 = vmatpush1.msra.mxu0 0.0
  %10677 = vmatprep.subr.mxu0 0.0
  %10678 = vmatpush1.msra.mxu0 0.0
  %10679 = vmatprep.subr.mxu0 0.0
  %10680 = vmatpush1.msra.mxu0 0.0
  %10681 = vmatprep.subr.mxu0 0.0
  %10682 = vmatpush1.msra.mxu0 0.0
  %10683 = vmatprep.subr.mxu0 0.0
  %10684 = vmatpush1.msra.mxu0 0.0
  %10685 = vmatprep.subr.mxu0 0.0
  %10686 = vmatpush1.msra.mxu0 0.0
  %10687 = vmatprep.subr.mxu0 0.0
  %10688 = vmatpush1.msra.mxu0 0.0
  %10689 = vmatprep.subr.mxu0 0.0
  %10690 = vmatpush1.msra.mxu0 0.0
  %10691 = vmatprep.subr.mxu0 0.0
  %10692 = vmatpush1.msra.mxu0 0.0
  %10693 = vmatprep.subr.mxu0 0.0
  %10694 = vmatpush1.msra.mxu0 0.0
  %10695 = vmatprep.subr.mxu0 0.0
  %10696 = vmatpush1.msra.mxu0 0.0
  %10697 = vmatprep.subr.mxu0 0.0
  %10698 = vmatpush1.msra.mxu0 0.0
  %10699 = vmatprep.subr.mxu0 0.0
  %10700 = vmatpush1.msra.mxu0 0.0
  %10701 = vmatprep.subr.mxu0 0.0
  %10702 = vmatpush1.msra.mxu0 0.0
  %10703 = vmatprep.subr.mxu0 0.0
  %10704 = vmatpush1.msra.mxu0 0.0
  %10705 = vmatprep.subr.mxu0 0.0
  %10706 = vmatpush1.msra.mxu0 0.0
  %10707 = vmatprep.subr.mxu0 0.0
  %10708 = vmatpush1.msra.mxu0 0.0
  %10709 = vmatprep.subr.mxu0 0.0
  %10710 = vmatpush1.msra.mxu0 0.0
  %10711 = vmatprep.subr.mxu0 0.0
  %10712 = vmatpush1.msra.mxu0 0.0
  %10713 = vmatprep.subr.mxu0 0.0
  %10714 = vmatpush1.msra.mxu0 0.0
  %10715 = vmatprep.subr.mxu0 0.0
  %10716 = vmatpush1.msra.mxu0 0.0
  %10717 = vmatprep.subr.mxu0 0.0
  %10718 = vmatpush1.msra.mxu0 0.0
  %10719 = vmatprep.subr.mxu0 0.0
  %10720 = vmatpush1.msra.mxu0 0.0
  %10721 = vmatprep.subr.mxu0 0.0
  %10722 = vmatpush1.msra.mxu0 0.0
  %10723 = vmatprep.subr.mxu0 0.0
  %10724 = vmatpush1.msra.mxu0 0.0
  %10725 = vmatprep.mubr.f32.mxu0 0.0
  %10726 = vmatmul.mubr.f32.gmra.mrb[0].mxu0 %v10656
  %v10727 = vpop.f32.mrb[0].mxu0
  %v10728 = vadd.f32 0.0, %v10727
  %v10729 = vpop.f32.mrb[0].mxu0
  %10730 = vmatprep.mubr.f32.mxu0 0.0
  %10731 = vmatmul.mubr.f32.gmra.mrb[0].mxu0 %v10659
  %v10732 = vpop.f32.mrb[0].mxu0
  %v10733 = vadd.f32 0.0, %v10732
  %v10734 = vpop.f32.mrb[0].mxu0
  %10735 = vdwg.mxu0
  %v10737 = vsel %vm5533, %v8817, 0
  %v10740 = vsel %vm5533, %v8822, 0
  %10742 = vmatprep.subr.mxu0 0.0
  %10743 = vmatpush1.msra.mxu0 %v93
  %10744 = vmatprep.subr.mxu0 0.0
  %10745 = vmatpush1.msra.mxu0 0.0
  %10746 = vmatprep.subr.mxu0 0.0
  %10747 = vmatpush1.msra.mxu0 0.0
  %10748 = vmatprep.subr.mxu0 0.0
  %10749 = vmatpush1.msra.mxu0 0.0
  %10750 = vmatprep.subr.mxu0 0.0
  %10751 = vmatpush1.msra.mxu0 0.0
  %10752 = vmatprep.subr.mxu0 0.0
  %10753 = vmatpush1.msra.mxu0 0.0
  %10754 = vmatprep.subr.mxu0 0.0
  %10755 = vmatpush1.msra.mxu0 0.0
  %10756 = vmatprep.subr.mxu0 0.0
  %10757 = vmatpush1.msra.mxu0 0.0
  %10758 = vmatprep.subr.mxu0 0.0
  %10759 = vmatpush1.msra.mxu0 0.0
  %10760 = vmatprep.subr.mxu0 0.0
  %10761 = vmatpush1.msra.mxu0 0.0
  %10762 = vmatprep.subr.mxu0 0.0
  %10763 = vmatpush1.msra.mxu0 0.0
  %10764 = vmatprep.subr.mxu0 0.0
  %10765 = vmatpush1.msra.mxu0 0.0
  %10766 = vmatprep.subr.mxu0 0.0
  %10767 = vmatpush1.msra.mxu0 0.0
  %10768 = vmatprep.subr.mxu0 0.0
  %10769 = vmatpush1.msra.mxu0 0.0
  %10770 = vmatprep.subr.mxu0 0.0
  %10771 = vmatpush1.msra.mxu0 0.0
  %10772 = vmatprep.subr.mxu0 0.0
  %10773 = vmatpush1.msra.mxu0 0.0
  %10774 = vmatprep.subr.mxu0 0.0
  %10775 = vmatpush1.msra.mxu0 0.0
  %10776 = vmatprep.subr.mxu0 0.0
  %10777 = vmatpush1.msra.mxu0 0.0
  %10778 = vmatprep.subr.mxu0 0.0
  %10779 = vmatpush1.msra.mxu0 0.0
  %10780 = vmatprep.subr.mxu0 0.0
  %10781 = vmatpush1.msra.mxu0 0.0
  %10782 = vmatprep.subr.mxu0 0.0
  %10783 = vmatpush1.msra.mxu0 0.0
  %10784 = vmatprep.subr.mxu0 0.0
  %10785 = vmatpush1.msra.mxu0 0.0
  %10786 = vmatprep.subr.mxu0 0.0
  %10787 = vmatpush1.msra.mxu0 0.0
  %10788 = vmatprep.subr.mxu0 0.0
  %10789 = vmatpush1.msra.mxu0 0.0
  %10790 = vmatprep.subr.mxu0 0.0
  %10791 = vmatpush1.msra.mxu0 0.0
  %10792 = vmatprep.subr.mxu0 0.0
  %10793 = vmatpush1.msra.mxu0 0.0
  %10794 = vmatprep.subr.mxu0 0.0
  %10795 = vmatpush1.msra.mxu0 0.0
  %10796 = vmatprep.subr.mxu0 0.0
  %10797 = vmatpush1.msra.mxu0 0.0
  %10798 = vmatprep.subr.mxu0 0.0
  %10799 = vmatpush1.msra.mxu0 0.0
  %10800 = vmatprep.subr.mxu0 0.0
  %10801 = vmatpush1.msra.mxu0 0.0
  %10802 = vmatprep.subr.mxu0 0.0
  %10803 = vmatpush1.msra.mxu0 0.0
  %10804 = vmatprep.subr.mxu0 0.0
  %10805 = vmatpush1.msra.mxu0 0.0
  %10806 = vmatprep.mubr.f32.mxu0 0.0
  %10807 = vmatmul.mubr.f32.gmra.mrb[0].mxu0 %v10737
  %v10808 = vpop.f32.mrb[0].mxu0
  %v10809 = vadd.f32 0.0, %v10808
  %v10810 = vpop.f32.mrb[0].mxu0
  %10811 = vmatprep.mubr.f32.mxu0 0.0
  %10812 = vmatmul.mubr.f32.gmra.mrb[0].mxu0 %v10740
  %v10813 = vpop.f32.mrb[0].mxu0
  %v10814 = vadd.f32 0.0, %v10813
  %v10815 = vpop.f32.mrb[0].mxu0
  %10816 = vdwg.mxu0
  %v10818 = vsel %vm5533, %v8901, 0
  %v10821 = vsel %vm5533, %v8906, 0
  %10823 = vmatprep.subr.mxu0 0.0
  %10824 = vmatpush1.msra.mxu0 %v93
  %10825 = vmatprep.subr.mxu0 0.0
  %10826 = vmatpush1.msra.mxu0 0.0
  %10827 = vmatprep.subr.mxu0 0.0
  %10828 = vmatpush1.msra.mxu0 0.0
  %10829 = vmatprep.subr.mxu0 0.0
  %10830 = vmatpush1.msra.mxu0 0.0
  %10831 = vmatprep.subr.mxu0 0.0
  %10832 = vmatpush1.msra.mxu0 0.0
  %10833 = vmatprep.subr.mxu0 0.0
  %10834 = vmatpush1.msra.mxu0 0.0
  %10835 = vmatprep.subr.mxu0 0.0
  %10836 = vmatpush1.msra.mxu0 0.0
  %10837 = vmatprep.subr.mxu0 0.0
  %10838 = vmatpush1.msra.mxu0 0.0
  %10839 = vmatprep.subr.mxu0 0.0
  %10840 = vmatpush1.msra.mxu0 0.0
  %10841 = vmatprep.subr.mxu0 0.0
  %10842 = vmatpush1.msra.mxu0 0.0
  %10843 = vmatprep.subr.mxu0 0.0
  %10844 = vmatpush1.msra.mxu0 0.0
  %10845 = vmatprep.subr.mxu0 0.0
  %10846 = vmatpush1.msra.mxu0 0.0
  %10847 = vmatprep.subr.mxu0 0.0
  %10848 = vmatpush1.msra.mxu0 0.0
  %10849 = vmatprep.subr.mxu0 0.0
  %10850 = vmatpush1.msra.mxu0 0.0
  %10851 = vmatprep.subr.mxu0 0.0
  %10852 = vmatpush1.msra.mxu0 0.0
  %10853 = vmatprep.subr.mxu0 0.0
  %10854 = vmatpush1.msra.mxu0 0.0
  %10855 = vmatprep.subr.mxu0 0.0
  %10856 = vmatpush1.msra.mxu0 0.0
  %10857 = vmatprep.subr.mxu0 0.0
  %10858 = vmatpush1.msra.mxu0 0.0
  %10859 = vmatprep.subr.mxu0 0.0
  %10860 = vmatpush1.msra.mxu0 0.0
  %10861 = vmatprep.subr.mxu0 0.0
  %10862 = vmatpush1.msra.mxu0 0.0
  %10863 = vmatprep.subr.mxu0 0.0
  %10864 = vmatpush1.msra.mxu0 0.0
  %10865 = vmatprep.subr.mxu0 0.0
  %10866 = vmatpush1.msra.mxu0 0.0
  %10867 = vmatprep.subr.mxu0 0.0
  %10868 = vmatpush1.msra.mxu0 0.0
  %10869 = vmatprep.subr.mxu0 0.0
  %10870 = vmatpush1.msra.mxu0 0.0
  %10871 = vmatprep.subr.mxu0 0.0
  %10872 = vmatpush1.msra.mxu0 0.0
  %10873 = vmatprep.subr.mxu0 0.0
  %10874 = vmatpush1.msra.mxu0 0.0
  %10875 = vmatprep.subr.mxu0 0.0
  %10876 = vmatpush1.msra.mxu0 0.0
  %10877 = vmatprep.subr.mxu0 0.0
  %10878 = vmatpush1.msra.mxu0 0.0
  %10879 = vmatprep.subr.mxu0 0.0
  %10880 = vmatpush1.msra.mxu0 0.0
  %10881 = vmatprep.subr.mxu0 0.0
  %10882 = vmatpush1.msra.mxu0 0.0
  %10883 = vmatprep.subr.mxu0 0.0
  %10884 = vmatpush1.msra.mxu0 0.0
  %10885 = vmatprep.subr.mxu0 0.0
  %10886 = vmatpush1.msra.mxu0 0.0
  %10887 = vmatprep.mubr.f32.mxu0 0.0
  %10888 = vmatmul.mubr.f32.gmra.mrb[0].mxu0 %v10818
  %v10889 = vpop.f32.mrb[0].mxu0
  %v10890 = vadd.f32 0.0, %v10889
  %v10891 = vpop.f32.mrb[0].mxu0
  %10892 = vmatprep.mubr.f32.mxu0 0.0
  %10893 = vmatmul.mubr.f32.gmra.mrb[0].mxu0 %v10821
  %v10894 = vpop.f32.mrb[0].mxu0
  %v10895 = vadd.f32 0.0, %v10894
  %v10896 = vpop.f32.mrb[0].mxu0
  %10897 = vdwg.mxu0
  %v10899 = vsel %vm5533, %v8985, 0
  %v10902 = vsel %vm5533, %v8990, 0
  %10904 = vmatprep.subr.mxu0 0.0
  %10905 = vmatpush1.msra.mxu0 %v93
  %10906 = vmatprep.subr.mxu0 0.0
  %10907 = vmatpush1.msra.mxu0 0.0
  %10908 = vmatprep.subr.mxu0 0.0
  %10909 = vmatpush1.msra.mxu0 0.0
  %10910 = vmatprep.subr.mxu0 0.0
  %10911 = vmatpush1.msra.mxu0 0.0
  %10912 = vmatprep.subr.mxu0 0.0
  %10913 = vmatpush1.msra.mxu0 0.0
  %10914 = vmatprep.subr.mxu0 0.0
  %10915 = vmatpush1.msra.mxu0 0.0
  %10916 = vmatprep.subr.mxu0 0.0
  %10917 = vmatpush1.msra.mxu0 0.0
  %10918 = vmatprep.subr.mxu0 0.0
  %10919 = vmatpush1.msra.mxu0 0.0
  %10920 = vmatprep.subr.mxu0 0.0
  %10921 = vmatpush1.msra.mxu0 0.0
  %10922 = vmatprep.subr.mxu0 0.0
  %10923 = vmatpush1.msra.mxu0 0.0
  %10924 = vmatprep.subr.mxu0 0.0
  %10925 = vmatpush1.msra.mxu0 0.0
  %10926 = vmatprep.subr.mxu0 0.0
  %10927 = vmatpush1.msra.mxu0 0.0
  %10928 = vmatprep.subr.mxu0 0.0
  %10929 = vmatpush1.msra.mxu0 0.0
  %10930 = vmatprep.subr.mxu0 0.0
  %10931 = vmatpush1.msra.mxu0 0.0
  %10932 = vmatprep.subr.mxu0 0.0
  %10933 = vmatpush1.msra.mxu0 0.0
  %10934 = vmatprep.subr.mxu0 0.0
  %10935 = vmatpush1.msra.mxu0 0.0
  %10936 = vmatprep.subr.mxu0 0.0
  %10937 = vmatpush1.msra.mxu0 0.0
  %10938 = vmatprep.subr.mxu0 0.0
  %10939 = vmatpush1.msra.mxu0 0.0
  %10940 = vmatprep.subr.mxu0 0.0
  %10941 = vmatpush1.msra.mxu0 0.0
  %10942 = vmatprep.subr.mxu0 0.0
  %10943 = vmatpush1.msra.mxu0 0.0
  %10944 = vmatprep.subr.mxu0 0.0
  %10945 = vmatpush1.msra.mxu0 0.0
  %10946 = vmatprep.subr.mxu0 0.0
  %10947 = vmatpush1.msra.mxu0 0.0
  %10948 = vmatprep.subr.mxu0 0.0
  %10949 = vmatpush1.msra.mxu0 0.0
  %10950 = vmatprep.subr.mxu0 0.0
  %10951 = vmatpush1.msra.mxu0 0.0
  %10952 = vmatprep.subr.mxu0 0.0
  %10953 = vmatpush1.msra.mxu0 0.0
  %10954 = vmatprep.subr.mxu0 0.0
  %10955 = vmatpush1.msra.mxu0 0.0
  %10956 = vmatprep.subr.mxu0 0.0
  %10957 = vmatpush1.msra.mxu0 0.0
  %10958 = vmatprep.subr.mxu0 0.0
  %10959 = vmatpush1.msra.mxu0 0.0
  %10960 = vmatprep.subr.mxu0 0.0
  %10961 = vmatpush1.msra.mxu0 0.0
  %10962 = vmatprep.subr.mxu0 0.0
  %10963 = vmatpush1.msra.mxu0 0.0
  %10964 = vmatprep.subr.mxu0 0.0
  %10965 = vmatpush1.msra.mxu0 0.0
  %10966 = vmatprep.subr.mxu0 0.0
  %10967 = vmatpush1.msra.mxu0 0.0
  %10968 = vmatprep.mubr.f32.mxu0 0.0
  %10969 = vmatmul.mubr.f32.gmra.mrb[0].mxu0 %v10899
  %v10970 = vpop.f32.mrb[0].mxu0
  %v10971 = vadd.f32 0.0, %v10970
  %v10972 = vpop.f32.mrb[0].mxu0
  %10973 = vmatprep.mubr.f32.mxu0 0.0
  %10974 = vmatmul.mubr.f32.gmra.mrb[0].mxu0 %v10902
  %v10975 = vpop.f32.mrb[0].mxu0
  %v10976 = vadd.f32 0.0, %v10975
  %v10977 = vpop.f32.mrb[0].mxu0
  %10978 = vdwg.mxu0
  %v10980 = vsel %vm5533, %v9069, 0
  %v10983 = vsel %vm5533, %v9074, 0
  %10985 = vmatprep.subr.mxu0 0.0
  %10986 = vmatpush1.msra.mxu0 %v93
  %10987 = vmatprep.subr.mxu0 0.0
  %10988 = vmatpush1.msra.mxu0 0.0
  %10989 = vmatprep.subr.mxu0 0.0
  %10990 = vmatpush1.msra.mxu0 0.0
  %10991 = vmatprep.subr.mxu0 0.0
  %10992 = vmatpush1.msra.mxu0 0.0
  %10993 = vmatprep.subr.mxu0 0.0
  %10994 = vmatpush1.msra.mxu0 0.0
  %10995 = vmatprep.subr.mxu0 0.0
  %10996 = vmatpush1.msra.mxu0 0.0
  %10997 = vmatprep.subr.mxu0 0.0
  %10998 = vmatpush1.msra.mxu0 0.0
  %10999 = vmatprep.subr.mxu0 0.0
  %11000 = vmatpush1.msra.mxu0 0.0
  %11001 = vmatprep.subr.mxu0 0.0
  %11002 = vmatpush1.msra.mxu0 0.0
  %11003 = vmatprep.subr.mxu0 0.0
  %11004 = vmatpush1.msra.mxu0 0.0
  %11005 = vmatprep.subr.mxu0 0.0
  %11006 = vmatpush1.msra.mxu0 0.0
  %11007 = vmatprep.subr.mxu0 0.0
  %11008 = vmatpush1.msra.mxu0 0.0
  %11009 = vmatprep.subr.mxu0 0.0
  %11010 = vmatpush1.msra.mxu0 0.0
  %11011 = vmatprep.subr.mxu0 0.0
  %11012 = vmatpush1.msra.mxu0 0.0
  %11013 = vmatprep.subr.mxu0 0.0
  %11014 = vmatpush1.msra.mxu0 0.0
  %11015 = vmatprep.subr.mxu0 0.0
  %11016 = vmatpush1.msra.mxu0 0.0
  %11017 = vmatprep.subr.mxu0 0.0
  %11018 = vmatpush1.msra.mxu0 0.0
  %11019 = vmatprep.subr.mxu0 0.0
  %11020 = vmatpush1.msra.mxu0 0.0
  %11021 = vmatprep.subr.mxu0 0.0
  %11022 = vmatpush1.msra.mxu0 0.0
  %11023 = vmatprep.subr.mxu0 0.0
  %11024 = vmatpush1.msra.mxu0 0.0
  %11025 = vmatprep.subr.mxu0 0.0
  %11026 = vmatpush1.msra.mxu0 0.0
  %11027 = vmatprep.subr.mxu0 0.0
  %11028 = vmatpush1.msra.mxu0 0.0
  %11029 = vmatprep.subr.mxu0 0.0
  %11030 = vmatpush1.msra.mxu0 0.0
  %11031 = vmatprep.subr.mxu0 0.0
  %11032 = vmatpush1.msra.mxu0 0.0
  %11033 = vmatprep.subr.mxu0 0.0
  %11034 = vmatpush1.msra.mxu0 0.0
  %11035 = vmatprep.subr.mxu0 0.0
  %11036 = vmatpush1.msra.mxu0 0.0
  %11037 = vmatprep.subr.mxu0 0.0
  %11038 = vmatpush1.msra.mxu0 0.0
  %11039 = vmatprep.subr.mxu0 0.0
  %11040 = vmatpush1.msra.mxu0 0.0
  %11041 = vmatprep.subr.mxu0 0.0
  %11042 = vmatpush1.msra.mxu0 0.0
  %11043 = vmatprep.subr.mxu0 0.0
  %11044 = vmatpush1.msra.mxu0 0.0
  %11045 = vmatprep.subr.mxu0 0.0
  %11046 = vmatpush1.msra.mxu0 0.0
  %11047 = vmatprep.subr.mxu0 0.0
  %11048 = vmatpush1.msra.mxu0 0.0
  %11049 = vmatprep.mubr.f32.mxu0 0.0
  %11050 = vmatmul.mubr.f32.gmra.mrb[0].mxu0 %v10980
  %v11051 = vpop.f32.mrb[0].mxu0
  %v11052 = vadd.f32 0.0, %v11051
  %v11053 = vpop.f32.mrb[0].mxu0
  %11054 = vmatprep.mubr.f32.mxu0 0.0
  %11055 = vmatmul.mubr.f32.gmra.mrb[0].mxu0 %v10983
  %v11056 = vpop.f32.mrb[0].mxu0
  %v11057 = vadd.f32 0.0, %v11056
  %v11058 = vpop.f32.mrb[0].mxu0
  %11059 = vdwg.mxu0
  %v11061 = vsel %vm5533, %v9153, 0
  %v11064 = vsel %vm5533, %v9158, 0
  %11066 = vmatprep.subr.mxu0 0.0
  %11067 = vmatpush1.msra.mxu0 %v93
  %11068 = vmatprep.subr.mxu0 0.0
  %11069 = vmatpush1.msra.mxu0 0.0
  %11070 = vmatprep.subr.mxu0 0.0
  %11071 = vmatpush1.msra.mxu0 0.0
  %11072 = vmatprep.subr.mxu0 0.0
  %11073 = vmatpush1.msra.mxu0 0.0
  %11074 = vmatprep.subr.mxu0 0.0
  %11075 = vmatpush1.msra.mxu0 0.0
  %11076 = vmatprep.subr.mxu0 0.0
  %11077 = vmatpush1.msra.mxu0 0.0
  %11078 = vmatprep.subr.mxu0 0.0
  %11079 = vmatpush1.msra.mxu0 0.0
  %11080 = vmatprep.subr.mxu0 0.0
  %11081 = vmatpush1.msra.mxu0 0.0
  %11082 = vmatprep.subr.mxu0 0.0
  %11083 = vmatpush1.msra.mxu0 0.0
  %11084 = vmatprep.subr.mxu0 0.0
  %11085 = vmatpush1.msra.mxu0 0.0
  %11086 = vmatprep.subr.mxu0 0.0
  %11087 = vmatpush1.msra.mxu0 0.0
  %11088 = vmatprep.subr.mxu0 0.0
  %11089 = vmatpush1.msra.mxu0 0.0
  %11090 = vmatprep.subr.mxu0 0.0
  %11091 = vmatpush1.msra.mxu0 0.0
  %11092 = vmatprep.subr.mxu0 0.0
  %11093 = vmatpush1.msra.mxu0 0.0
  %11094 = vmatprep.subr.mxu0 0.0
  %11095 = vmatpush1.msra.mxu0 0.0
  %11096 = vmatprep.subr.mxu0 0.0
  %11097 = vmatpush1.msra.mxu0 0.0
  %11098 = vmatprep.subr.mxu0 0.0
  %11099 = vmatpush1.msra.mxu0 0.0
  %11100 = vmatprep.subr.mxu0 0.0
  %11101 = vmatpush1.msra.mxu0 0.0
  %11102 = vmatprep.subr.mxu0 0.0
  %11103 = vmatpush1.msra.mxu0 0.0
  %11104 = vmatprep.subr.mxu0 0.0
  %11105 = vmatpush1.msra.mxu0 0.0
  %11106 = vmatprep.subr.mxu0 0.0
  %11107 = vmatpush1.msra.mxu0 0.0
  %11108 = vmatprep.subr.mxu0 0.0
  %11109 = vmatpush1.msra.mxu0 0.0
  %11110 = vmatprep.subr.mxu0 0.0
  %11111 = vmatpush1.msra.mxu0 0.0
  %11112 = vmatprep.subr.mxu0 0.0
  %11113 = vmatpush1.msra.mxu0 0.0
  %11114 = vmatprep.subr.mxu0 0.0
  %11115 = vmatpush1.msra.mxu0 0.0
  %11116 = vmatprep.subr.mxu0 0.0
  %11117 = vmatpush1.msra.mxu0 0.0
  %11118 = vmatprep.subr.mxu0 0.0
  %11119 = vmatpush1.msra.mxu0 0.0
  %11120 = vmatprep.subr.mxu0 0.0
  %11121 = vmatpush1.msra.mxu0 0.0
  %11122 = vmatprep.subr.mxu0 0.0
  %11123 = vmatpush1.msra.mxu0 0.0
  %11124 = vmatprep.subr.mxu0 0.0
  %11125 = vmatpush1.msra.mxu0 0.0
  %11126 = vmatprep.subr.mxu0 0.0
  %11127 = vmatpush1.msra.mxu0 0.0
  %11128 = vmatprep.subr.mxu0 0.0
  %11129 = vmatpush1.msra.mxu0 0.0
  %11130 = vmatprep.mubr.f32.mxu0 0.0
  %11131 = vmatmul.mubr.f32.gmra.mrb[0].mxu0 %v11061
  %v11132 = vpop.f32.mrb[0].mxu0
  %v11133 = vadd.f32 0.0, %v11132
  %v11134 = vpop.f32.mrb[0].mxu0
  %11135 = vmatprep.mubr.f32.mxu0 0.0
  %11136 = vmatmul.mubr.f32.gmra.mrb[0].mxu0 %v11064
  %v11137 = vpop.f32.mrb[0].mxu0
  %v11138 = vadd.f32 0.0, %v11137
  %v11139 = vpop.f32.mrb[0].mxu0
  %11140 = vdwg.mxu0
  %v11142 = vsel %vm5533, %v9237, 0
  %v11145 = vsel %vm5533, %v9242, 0
  %11147 = vmatprep.subr.mxu0 0.0
  %11148 = vmatpush1.msra.mxu0 %v94
  %11149 = vmatprep.subr.mxu0 0.0
  %11150 = vmatpush1.msra.mxu0 0.0
  %11151 = vmatprep.subr.mxu0 0.0
  %11152 = vmatpush1.msra.mxu0 0.0
  %11153 = vmatprep.subr.mxu0 0.0
  %11154 = vmatpush1.msra.mxu0 0.0
  %11155 = vmatprep.subr.mxu0 0.0
  %11156 = vmatpush1.msra.mxu0 0.0
  %11157 = vmatprep.subr.mxu0 0.0
  %11158 = vmatpush1.msra.mxu0 0.0
  %11159 = vmatprep.subr.mxu0 0.0
  %11160 = vmatpush1.msra.mxu0 0.0
  %11161 = vmatprep.subr.mxu0 0.0
  %11162 = vmatpush1.msra.mxu0 0.0
  %11163 = vmatprep.subr.mxu0 0.0
  %11164 = vmatpush1.msra.mxu0 0.0
  %11165 = vmatprep.subr.mxu0 0.0
  %11166 = vmatpush1.msra.mxu0 0.0
  %11167 = vmatprep.subr.mxu0 0.0
  %11168 = vmatpush1.msra.mxu0 0.0
  %11169 = vmatprep.subr.mxu0 0.0
  %11170 = vmatpush1.msra.mxu0 0.0
  %11171 = vmatprep.subr.mxu0 0.0
  %11172 = vmatpush1.msra.mxu0 0.0
  %11173 = vmatprep.subr.mxu0 0.0
  %11174 = vmatpush1.msra.mxu0 0.0
  %11175 = vmatprep.subr.mxu0 0.0
  %11176 = vmatpush1.msra.mxu0 0.0
  %11177 = vmatprep.subr.mxu0 0.0
  %11178 = vmatpush1.msra.mxu0 0.0
  %11179 = vmatprep.subr.mxu0 0.0
  %11180 = vmatpush1.msra.mxu0 0.0
  %11181 = vmatprep.subr.mxu0 0.0
  %11182 = vmatpush1.msra.mxu0 0.0
  %11183 = vmatprep.subr.mxu0 0.0
  %11184 = vmatpush1.msra.mxu0 0.0
  %11185 = vmatprep.subr.mxu0 0.0
  %11186 = vmatpush1.msra.mxu0 0.0
  %11187 = vmatprep.subr.mxu0 0.0
  %11188 = vmatpush1.msra.mxu0 0.0
  %11189 = vmatprep.subr.mxu0 0.0
  %11190 = vmatpush1.msra.mxu0 0.0
  %11191 = vmatprep.subr.mxu0 0.0
  %11192 = vmatpush1.msra.mxu0 0.0
  %11193 = vmatprep.subr.mxu0 0.0
  %11194 = vmatpush1.msra.mxu0 0.0
  %11195 = vmatprep.subr.mxu0 0.0
  %11196 = vmatpush1.msra.mxu0 0.0
  %11197 = vmatprep.subr.mxu0 0.0
  %11198 = vmatpush1.msra.mxu0 0.0
  %11199 = vmatprep.subr.mxu0 0.0
  %11200 = vmatpush1.msra.mxu0 0.0
  %11201 = vmatprep.subr.mxu0 0.0
  %11202 = vmatpush1.msra.mxu0 0.0
  %11203 = vmatprep.subr.mxu0 0.0
  %11204 = vmatpush1.msra.mxu0 0.0
  %11205 = vmatprep.subr.mxu0 0.0
  %11206 = vmatpush1.msra.mxu0 0.0
  %11207 = vmatprep.subr.mxu0 0.0
  %11208 = vmatpush1.msra.mxu0 0.0
  %11209 = vmatprep.subr.mxu0 0.0
  %11210 = vmatpush1.msra.mxu0 0.0
  %11211 = vmatprep.mubr.f32.mxu0 0.0
  %11212 = vmatmul.mubr.f32.gmra.mrb[0].mxu0 %v11142
  %v11213 = vpop.f32.mrb[0].mxu0
  %v11214 = vadd.f32 0.0, %v11213
  %v11215 = vpop.f32.mrb[0].mxu0
  %11216 = vmatprep.mubr.f32.mxu0 0.0
  %11217 = vmatmul.mubr.f32.gmra.mrb[0].mxu0 %v11145
  %v11218 = vpop.f32.mrb[0].mxu0
  %v11219 = vadd.f32 0.0, %v11218
  %v11220 = vpop.f32.mrb[0].mxu0
  %11221 = vdwg.mxu0
  %v11223 = vsel %vm5533, %v9321, 0
  %v11226 = vsel %vm5533, %v9326, 0
  %11228 = vmatprep.subr.mxu0 0.0
  %11229 = vmatpush1.msra.mxu0 %v94
  %11230 = vmatprep.subr.mxu0 0.0
  %11231 = vmatpush1.msra.mxu0 0.0
  %11232 = vmatprep.subr.mxu0 0.0
  %11233 = vmatpush1.msra.mxu0 0.0
  %11234 = vmatprep.subr.mxu0 0.0
  %11235 = vmatpush1.msra.mxu0 0.0
  %11236 = vmatprep.subr.mxu0 0.0
  %11237 = vmatpush1.msra.mxu0 0.0
  %11238 = vmatprep.subr.mxu0 0.0
  %11239 = vmatpush1.msra.mxu0 0.0
  %11240 = vmatprep.subr.mxu0 0.0
  %11241 = vmatpush1.msra.mxu0 0.0
  %11242 = vmatprep.subr.mxu0 0.0
  %11243 = vmatpush1.msra.mxu0 0.0
  %11244 = vmatprep.subr.mxu0 0.0
  %11245 = vmatpush1.msra.mxu0 0.0
  %11246 = vmatprep.subr.mxu0 0.0
  %11247 = vmatpush1.msra.mxu0 0.0
  %11248 = vmatprep.subr.mxu0 0.0
  %11249 = vmatpush1.msra.mxu0 0.0
  %11250 = vmatprep.subr.mxu0 0.0
  %11251 = vmatpush1.msra.mxu0 0.0
  %11252 = vmatprep.subr.mxu0 0.0
  %11253 = vmatpush1.msra.mxu0 0.0
  %11254 = vmatprep.subr.mxu0 0.0
  %11255 = vmatpush1.msra.mxu0 0.0
  %11256 = vmatprep.subr.mxu0 0.0
  %11257 = vmatpush1.msra.mxu0 0.0
  %11258 = vmatprep.subr.mxu0 0.0
  %11259 = vmatpush1.msra.mxu0 0.0
  %11260 = vmatprep.subr.mxu0 0.0
  %11261 = vmatpush1.msra.mxu0 0.0
  %11262 = vmatprep.subr.mxu0 0.0
  %11263 = vmatpush1.msra.mxu0 0.0
  %11264 = vmatprep.subr.mxu0 0.0
  %11265 = vmatpush1.msra.mxu0 0.0
  %11266 = vmatprep.subr.mxu0 0.0
  %11267 = vmatpush1.msra.mxu0 0.0
  %11268 = vmatprep.subr.mxu0 0.0
  %11269 = vmatpush1.msra.mxu0 0.0
  %11270 = vmatprep.subr.mxu0 0.0
  %11271 = vmatpush1.msra.mxu0 0.0
  %11272 = vmatprep.subr.mxu0 0.0
  %11273 = vmatpush1.msra.mxu0 0.0
  %11274 = vmatprep.subr.mxu0 0.0
  %11275 = vmatpush1.msra.mxu0 0.0
  %11276 = vmatprep.subr.mxu0 0.0
  %11277 = vmatpush1.msra.mxu0 0.0
  %11278 = vmatprep.subr.mxu0 0.0
  %11279 = vmatpush1.msra.mxu0 0.0
  %11280 = vmatprep.subr.mxu0 0.0
  %11281 = vmatpush1.msra.mxu0 0.0
  %11282 = vmatprep.subr.mxu0 0.0
  %11283 = vmatpush1.msra.mxu0 0.0
  %11284 = vmatprep.subr.mxu0 0.0
  %11285 = vmatpush1.msra.mxu0 0.0
  %11286 = vmatprep.subr.mxu0 0.0
  %11287 = vmatpush1.msra.mxu0 0.0
  %11288 = vmatprep.subr.mxu0 0.0
  %11289 = vmatpush1.msra.mxu0 0.0
  %11290 = vmatprep.subr.mxu0 0.0
  %11291 = vmatpush1.msra.mxu0 0.0
  %11292 = vmatprep.mubr.f32.mxu0 0.0
  %11293 = vmatmul.mubr.f32.gmra.mrb[0].mxu0 %v11223
  %v11294 = vpop.f32.mrb[0].mxu0
  %v11295 = vadd.f32 0.0, %v11294
  %v11296 = vpop.f32.mrb[0].mxu0
  %11297 = vmatprep.mubr.f32.mxu0 0.0
  %11298 = vmatmul.mubr.f32.gmra.mrb[0].mxu0 %v11226
  %v11299 = vpop.f32.mrb[0].mxu0
  %v11300 = vadd.f32 0.0, %v11299
  %v11301 = vpop.f32.mrb[0].mxu0
  %11302 = vdwg.mxu0
  %v11304 = vsel %vm5533, %v9405, 0
  %v11307 = vsel %vm5533, %v9410, 0
  %11309 = vmatprep.subr.mxu0 0.0
  %11310 = vmatpush1.msra.mxu0 %v94
  %11311 = vmatprep.subr.mxu0 0.0
  %11312 = vmatpush1.msra.mxu0 0.0
  %11313 = vmatprep.subr.mxu0 0.0
  %11314 = vmatpush1.msra.mxu0 0.0
  %11315 = vmatprep.subr.mxu0 0.0
  %11316 = vmatpush1.msra.mxu0 0.0
  %11317 = vmatprep.subr.mxu0 0.0
  %11318 = vmatpush1.msra.mxu0 0.0
  %11319 = vmatprep.subr.mxu0 0.0
  %11320 = vmatpush1.msra.mxu0 0.0
  %11321 = vmatprep.subr.mxu0 0.0
  %11322 = vmatpush1.msra.mxu0 0.0
  %11323 = vmatprep.subr.mxu0 0.0
  %11324 = vmatpush1.msra.mxu0 0.0
  %11325 = vmatprep.subr.mxu0 0.0
  %11326 = vmatpush1.msra.mxu0 0.0
  %11327 = vmatprep.subr.mxu0 0.0
  %11328 = vmatpush1.msra.mxu0 0.0
  %11329 = vmatprep.subr.mxu0 0.0
  %11330 = vmatpush1.msra.mxu0 0.0
  %11331 = vmatprep.subr.mxu0 0.0
  %11332 = vmatpush1.msra.mxu0 0.0
  %11333 = vmatprep.subr.mxu0 0.0
  %11334 = vmatpush1.msra.mxu0 0.0
  %11335 = vmatprep.subr.mxu0 0.0
  %11336 = vmatpush1.msra.mxu0 0.0
  %11337 = vmatprep.subr.mxu0 0.0
  %11338 = vmatpush1.msra.mxu0 0.0
  %11339 = vmatprep.subr.mxu0 0.0
  %11340 = vmatpush1.msra.mxu0 0.0
  %11341 = vmatprep.subr.mxu0 0.0
  %11342 = vmatpush1.msra.mxu0 0.0
  %11343 = vmatprep.subr.mxu0 0.0
  %11344 = vmatpush1.msra.mxu0 0.0
  %11345 = vmatprep.subr.mxu0 0.0
  %11346 = vmatpush1.msra.mxu0 0.0
  %11347 = vmatprep.subr.mxu0 0.0
  %11348 = vmatpush1.msra.mxu0 0.0
  %11349 = vmatprep.subr.mxu0 0.0
  %11350 = vmatpush1.msra.mxu0 0.0
  %11351 = vmatprep.subr.mxu0 0.0
  %11352 = vmatpush1.msra.mxu0 0.0
  %11353 = vmatprep.subr.mxu0 0.0
  %11354 = vmatpush1.msra.mxu0 0.0
  %11355 = vmatprep.subr.mxu0 0.0
  %11356 = vmatpush1.msra.mxu0 0.0
  %11357 = vmatprep.subr.mxu0 0.0
  %11358 = vmatpush1.msra.mxu0 0.0
  %11359 = vmatprep.subr.mxu0 0.0
  %11360 = vmatpush1.msra.mxu0 0.0
  %11361 = vmatprep.subr.mxu0 0.0
  %11362 = vmatpush1.msra.mxu0 0.0
  %11363 = vmatprep.subr.mxu0 0.0
  %11364 = vmatpush1.msra.mxu0 0.0
  %11365 = vmatprep.subr.mxu0 0.0
  %11366 = vmatpush1.msra.mxu0 0.0
  %11367 = vmatprep.subr.mxu0 0.0
  %11368 = vmatpush1.msra.mxu0 0.0
  %11369 = vmatprep.subr.mxu0 0.0
  %11370 = vmatpush1.msra.mxu0 0.0
  %11371 = vmatprep.subr.mxu0 0.0
  %11372 = vmatpush1.msra.mxu0 0.0
  %11373 = vmatprep.mubr.f32.mxu0 0.0
  %11374 = vmatmul.mubr.f32.gmra.mrb[0].mxu0 %v11304
  %v11375 = vpop.f32.mrb[0].mxu0
  %v11376 = vadd.f32 0.0, %v11375
  %v11377 = vpop.f32.mrb[0].mxu0
  %11378 = vmatprep.mubr.f32.mxu0 0.0
  %11379 = vmatmul.mubr.f32.gmra.mrb[0].mxu0 %v11307
  %v11380 = vpop.f32.mrb[0].mxu0
  %v11381 = vadd.f32 0.0, %v11380
  %v11382 = vpop.f32.mrb[0].mxu0
  %11383 = vdwg.mxu0
  %v11385 = vsel %vm5533, %v9489, 0
  %v11388 = vsel %vm5533, %v9494, 0
  %11390 = vmatprep.subr.mxu0 0.0
  %11391 = vmatpush1.msra.mxu0 %v94
  %11392 = vmatprep.subr.mxu0 0.0
  %11393 = vmatpush1.msra.mxu0 0.0
  %11394 = vmatprep.subr.mxu0 0.0
  %11395 = vmatpush1.msra.mxu0 0.0
  %11396 = vmatprep.subr.mxu0 0.0
  %11397 = vmatpush1.msra.mxu0 0.0
  %11398 = vmatprep.subr.mxu0 0.0
  %11399 = vmatpush1.msra.mxu0 0.0
  %11400 = vmatprep.subr.mxu0 0.0
  %11401 = vmatpush1.msra.mxu0 0.0
  %11402 = vmatprep.subr.mxu0 0.0
  %11403 = vmatpush1.msra.mxu0 0.0
  %11404 = vmatprep.subr.mxu0 0.0
  %11405 = vmatpush1.msra.mxu0 0.0
  %11406 = vmatprep.subr.mxu0 0.0
  %11407 = vmatpush1.msra.mxu0 0.0
  %11408 = vmatprep.subr.mxu0 0.0
  %11409 = vmatpush1.msra.mxu0 0.0
  %11410 = vmatprep.subr.mxu0 0.0
  %11411 = vmatpush1.msra.mxu0 0.0
  %11412 = vmatprep.subr.mxu0 0.0
  %11413 = vmatpush1.msra.mxu0 0.0
  %11414 = vmatprep.subr.mxu0 0.0
  %11415 = vmatpush1.msra.mxu0 0.0
  %11416 = vmatprep.subr.mxu0 0.0
  %11417 = vmatpush1.msra.mxu0 0.0
  %11418 = vmatprep.subr.mxu0 0.0
  %11419 = vmatpush1.msra.mxu0 0.0
  %11420 = vmatprep.subr.mxu0 0.0
  %11421 = vmatpush1.msra.mxu0 0.0
  %11422 = vmatprep.subr.mxu0 0.0
  %11423 = vmatpush1.msra.mxu0 0.0
  %11424 = vmatprep.subr.mxu0 0.0
  %11425 = vmatpush1.msra.mxu0 0.0
  %11426 = vmatprep.subr.mxu0 0.0
  %11427 = vmatpush1.msra.mxu0 0.0
  %11428 = vmatprep.subr.mxu0 0.0
  %11429 = vmatpush1.msra.mxu0 0.0
  %11430 = vmatprep.subr.mxu0 0.0
  %11431 = vmatpush1.msra.mxu0 0.0
  %11432 = vmatprep.subr.mxu0 0.0
  %11433 = vmatpush1.msra.mxu0 0.0
  %11434 = vmatprep.subr.mxu0 0.0
  %11435 = vmatpush1.msra.mxu0 0.0
  %11436 = vmatprep.subr.mxu0 0.0
  %11437 = vmatpush1.msra.mxu0 0.0
  %11438 = vmatprep.subr.mxu0 0.0
  %11439 = vmatpush1.msra.mxu0 0.0
  %11440 = vmatprep.subr.mxu0 0.0
  %11441 = vmatpush1.msra.mxu0 0.0
  %11442 = vmatprep.subr.mxu0 0.0
  %11443 = vmatpush1.msra.mxu0 0.0
  %11444 = vmatprep.subr.mxu0 0.0
  %11445 = vmatpush1.msra.mxu0 0.0
  %11446 = vmatprep.subr.mxu0 0.0
  %11447 = vmatpush1.msra.mxu0 0.0
  %11448 = vmatprep.subr.mxu0 0.0
  %11449 = vmatpush1.msra.mxu0 0.0
  %11450 = vmatprep.subr.mxu0 0.0
  %11451 = vmatpush1.msra.mxu0 0.0
  %11452 = vmatprep.subr.mxu0 0.0
  %11453 = vmatpush1.msra.mxu0 0.0
  %11454 = vmatprep.mubr.f32.mxu0 0.0
  %11455 = vmatmul.mubr.f32.gmra.mrb[0].mxu0 %v11385
  %v11456 = vpop.f32.mrb[0].mxu0
  %v11457 = vadd.f32 0.0, %v11456
  %v11458 = vpop.f32.mrb[0].mxu0
  %11459 = vmatprep.mubr.f32.mxu0 0.0
  %11460 = vmatmul.mubr.f32.gmra.mrb[0].mxu0 %v11388
  %v11461 = vpop.f32.mrb[0].mxu0
  %v11462 = vadd.f32 0.0, %v11461
  %v11463 = vpop.f32.mrb[0].mxu0
  %11464 = vdwg.mxu0
  %v11466 = vsel %vm5533, %v9573, 0
  %v11469 = vsel %vm5533, %v9578, 0
  %11471 = vmatprep.subr.mxu0 0.0
  %11472 = vmatpush1.msra.mxu0 %v94
  %11473 = vmatprep.subr.mxu0 0.0
  %11474 = vmatpush1.msra.mxu0 0.0
  %11475 = vmatprep.subr.mxu0 0.0
  %11476 = vmatpush1.msra.mxu0 0.0
  %11477 = vmatprep.subr.mxu0 0.0
  %11478 = vmatpush1.msra.mxu0 0.0
  %11479 = vmatprep.subr.mxu0 0.0
  %11480 = vmatpush1.msra.mxu0 0.0
  %11481 = vmatprep.subr.mxu0 0.0
  %11482 = vmatpush1.msra.mxu0 0.0
  %11483 = vmatprep.subr.mxu0 0.0
  %11484 = vmatpush1.msra.mxu0 0.0
  %11485 = vmatprep.subr.mxu0 0.0
  %11486 = vmatpush1.msra.mxu0 0.0
  %11487 = vmatprep.subr.mxu0 0.0
  %11488 = vmatpush1.msra.mxu0 0.0
  %11489 = vmatprep.subr.mxu0 0.0
  %11490 = vmatpush1.msra.mxu0 0.0
  %11491 = vmatprep.subr.mxu0 0.0
  %11492 = vmatpush1.msra.mxu0 0.0
  %11493 = vmatprep.subr.mxu0 0.0
  %11494 = vmatpush1.msra.mxu0 0.0
  %11495 = vmatprep.subr.mxu0 0.0
  %11496 = vmatpush1.msra.mxu0 0.0
  %11497 = vmatprep.subr.mxu0 0.0
  %11498 = vmatpush1.msra.mxu0 0.0
  %11499 = vmatprep.subr.mxu0 0.0
  %11500 = vmatpush1.msra.mxu0 0.0
  %11501 = vmatprep.subr.mxu0 0.0
  %11502 = vmatpush1.msra.mxu0 0.0
  %11503 = vmatprep.subr.mxu0 0.0
  %11504 = vmatpush1.msra.mxu0 0.0
  %11505 = vmatprep.subr.mxu0 0.0
  %11506 = vmatpush1.msra.mxu0 0.0
  %11507 = vmatprep.subr.mxu0 0.0
  %11508 = vmatpush1.msra.mxu0 0.0
  %11509 = vmatprep.subr.mxu0 0.0
  %11510 = vmatpush1.msra.mxu0 0.0
  %11511 = vmatprep.subr.mxu0 0.0
  %11512 = vmatpush1.msra.mxu0 0.0
  %11513 = vmatprep.subr.mxu0 0.0
  %11514 = vmatpush1.msra.mxu0 0.0
  %11515 = vmatprep.subr.mxu0 0.0
  %11516 = vmatpush1.msra.mxu0 0.0
  %11517 = vmatprep.subr.mxu0 0.0
  %11518 = vmatpush1.msra.mxu0 0.0
  %11519 = vmatprep.subr.mxu0 0.0
  %11520 = vmatpush1.msra.mxu0 0.0
  %11521 = vmatprep.subr.mxu0 0.0
  %11522 = vmatpush1.msra.mxu0 0.0
  %11523 = vmatprep.subr.mxu0 0.0
  %11524 = vmatpush1.msra.mxu0 0.0
  %11525 = vmatprep.subr.mxu0 0.0
  %11526 = vmatpush1.msra.mxu0 0.0
  %11527 = vmatprep.subr.mxu0 0.0
  %11528 = vmatpush1.msra.mxu0 0.0
  %11529 = vmatprep.subr.mxu0 0.0
  %11530 = vmatpush1.msra.mxu0 0.0
  %11531 = vmatprep.subr.mxu0 0.0
  %11532 = vmatpush1.msra.mxu0 0.0
  %11533 = vmatprep.subr.mxu0 0.0
  %11534 = vmatpush1.msra.mxu0 0.0
  %11535 = vmatprep.mubr.f32.mxu0 0.0
  %11536 = vmatmul.mubr.f32.gmra.mrb[0].mxu0 %v11466
  %v11537 = vpop.f32.mrb[0].mxu0
  %v11538 = vadd.f32 0.0, %v11537
  %v11539 = vpop.f32.mrb[0].mxu0
  %11540 = vmatprep.mubr.f32.mxu0 0.0
  %11541 = vmatmul.mubr.f32.gmra.mrb[0].mxu0 %v11469
  %v11542 = vpop.f32.mrb[0].mxu0
  %v11543 = vadd.f32 0.0, %v11542
  %v11544 = vpop.f32.mrb[0].mxu0
  %11545 = vdwg.mxu0
  %v11547 = vsel %vm5533, %v9657, 0
  %v11550 = vsel %vm5533, %v9662, 0
  %11552 = vmatprep.subr.mxu0 0.0
  %11553 = vmatpush1.msra.mxu0 %v94
  %11554 = vmatprep.subr.mxu0 0.0
  %11555 = vmatpush1.msra.mxu0 0.0
  %11556 = vmatprep.subr.mxu0 0.0
  %11557 = vmatpush1.msra.mxu0 0.0
  %11558 = vmatprep.subr.mxu0 0.0
  %11559 = vmatpush1.msra.mxu0 0.0
  %11560 = vmatprep.subr.mxu0 0.0
  %11561 = vmatpush1.msra.mxu0 0.0
  %11562 = vmatprep.subr.mxu0 0.0
  %11563 = vmatpush1.msra.mxu0 0.0
  %11564 = vmatprep.subr.mxu0 0.0
  %11565 = vmatpush1.msra.mxu0 0.0
  %11566 = vmatprep.subr.mxu0 0.0
  %11567 = vmatpush1.msra.mxu0 0.0
  %11568 = vmatprep.subr.mxu0 0.0
  %11569 = vmatpush1.msra.mxu0 0.0
  %11570 = vmatprep.subr.mxu0 0.0
  %11571 = vmatpush1.msra.mxu0 0.0
  %11572 = vmatprep.subr.mxu0 0.0
  %11573 = vmatpush1.msra.mxu0 0.0
  %11574 = vmatprep.subr.mxu0 0.0
  %11575 = vmatpush1.msra.mxu0 0.0
  %11576 = vmatprep.subr.mxu0 0.0
  %11577 = vmatpush1.msra.mxu0 0.0
  %11578 = vmatprep.subr.mxu0 0.0
  %11579 = vmatpush1.msra.mxu0 0.0
  %11580 = vmatprep.subr.mxu0 0.0
  %11581 = vmatpush1.msra.mxu0 0.0
  %11582 = vmatprep.subr.mxu0 0.0
  %11583 = vmatpush1.msra.mxu0 0.0
  %11584 = vmatprep.subr.mxu0 0.0
  %11585 = vmatpush1.msra.mxu0 0.0
  %11586 = vmatprep.subr.mxu0 0.0
  %11587 = vmatpush1.msra.mxu0 0.0
  %11588 = vmatprep.subr.mxu0 0.0
  %11589 = vmatpush1.msra.mxu0 0.0
  %11590 = vmatprep.subr.mxu0 0.0
  %11591 = vmatpush1.msra.mxu0 0.0
  %11592 = vmatprep.subr.mxu0 0.0
  %11593 = vmatpush1.msra.mxu0 0.0
  %11594 = vmatprep.subr.mxu0 0.0
  %11595 = vmatpush1.msra.mxu0 0.0
  %11596 = vmatprep.subr.mxu0 0.0
  %11597 = vmatpush1.msra.mxu0 0.0
  %11598 = vmatprep.subr.mxu0 0.0
  %11599 = vmatpush1.msra.mxu0 0.0
  %11600 = vmatprep.subr.mxu0 0.0
  %11601 = vmatpush1.msra.mxu0 0.0
  %11602 = vmatprep.subr.mxu0 0.0
  %11603 = vmatpush1.msra.mxu0 0.0
  %11604 = vmatprep.subr.mxu0 0.0
  %11605 = vmatpush1.msra.mxu0 0.0
  %11606 = vmatprep.subr.mxu0 0.0
  %11607 = vmatpush1.msra.mxu0 0.0
  %11608 = vmatprep.subr.mxu0 0.0
  %11609 = vmatpush1.msra.mxu0 0.0
  %11610 = vmatprep.subr.mxu0 0.0
  %11611 = vmatpush1.msra.mxu0 0.0
  %11612 = vmatprep.subr.mxu0 0.0
  %11613 = vmatpush1.msra.mxu0 0.0
  %11614 = vmatprep.subr.mxu0 0.0
  %11615 = vmatpush1.msra.mxu0 0.0
  %11616 = vmatprep.mubr.f32.mxu0 0.0
  %11617 = vmatmul.mubr.f32.gmra.mrb[0].mxu0 %v11547
  %v11618 = vpop.f32.mrb[0].mxu0
  %v11619 = vadd.f32 0.0, %v11618
  %v11620 = vpop.f32.mrb[0].mxu0
  %11621 = vmatprep.mubr.f32.mxu0 0.0
  %11622 = vmatmul.mubr.f32.gmra.mrb[0].mxu0 %v11550
  %v11623 = vpop.f32.mrb[0].mxu0
  %v11624 = vadd.f32 0.0, %v11623
  %v11625 = vpop.f32.mrb[0].mxu0
  %11626 = vdwg.mxu0
  %v11628 = vsel %vm5533, %v9741, 0
  %v11631 = vsel %vm5533, %v9746, 0
  %11633 = vmatprep.subr.mxu0 0.0
  %11634 = vmatpush1.msra.mxu0 %v95
  %11635 = vmatprep.subr.mxu0 0.0
  %11636 = vmatpush1.msra.mxu0 0.0
  %11637 = vmatprep.subr.mxu0 0.0
  %11638 = vmatpush1.msra.mxu0 0.0
  %11639 = vmatprep.subr.mxu0 0.0
  %11640 = vmatpush1.msra.mxu0 0.0
  %11641 = vmatprep.subr.mxu0 0.0
  %11642 = vmatpush1.msra.mxu0 0.0
  %11643 = vmatprep.subr.mxu0 0.0
  %11644 = vmatpush1.msra.mxu0 0.0
  %11645 = vmatprep.subr.mxu0 0.0
  %11646 = vmatpush1.msra.mxu0 0.0
  %11647 = vmatprep.subr.mxu0 0.0
  %11648 = vmatpush1.msra.mxu0 0.0
  %11649 = vmatprep.subr.mxu0 0.0
  %11650 = vmatpush1.msra.mxu0 0.0
  %11651 = vmatprep.subr.mxu0 0.0
  %11652 = vmatpush1.msra.mxu0 0.0
  %11653 = vmatprep.subr.mxu0 0.0
  %11654 = vmatpush1.msra.mxu0 0.0
  %11655 = vmatprep.subr.mxu0 0.0
  %11656 = vmatpush1.msra.mxu0 0.0
  %11657 = vmatprep.subr.mxu0 0.0
  %11658 = vmatpush1.msra.mxu0 0.0
  %11659 = vmatprep.subr.mxu0 0.0
  %11660 = vmatpush1.msra.mxu0 0.0
  %11661 = vmatprep.subr.mxu0 0.0
  %11662 = vmatpush1.msra.mxu0 0.0
  %11663 = vmatprep.subr.mxu0 0.0
  %11664 = vmatpush1.msra.mxu0 0.0
  %11665 = vmatprep.subr.mxu0 0.0
  %11666 = vmatpush1.msra.mxu0 0.0
  %11667 = vmatprep.subr.mxu0 0.0
  %11668 = vmatpush1.msra.mxu0 0.0
  %11669 = vmatprep.subr.mxu0 0.0
  %11670 = vmatpush1.msra.mxu0 0.0
  %11671 = vmatprep.subr.mxu0 0.0
  %11672 = vmatpush1.msra.mxu0 0.0
  %11673 = vmatprep.subr.mxu0 0.0
  %11674 = vmatpush1.msra.mxu0 0.0
  %11675 = vmatprep.subr.mxu0 0.0
  %11676 = vmatpush1.msra.mxu0 0.0
  %11677 = vmatprep.subr.mxu0 0.0
  %11678 = vmatpush1.msra.mxu0 0.0
  %11679 = vmatprep.subr.mxu0 0.0
  %11680 = vmatpush1.msra.mxu0 0.0
  %11681 = vmatprep.subr.mxu0 0.0
  %11682 = vmatpush1.msra.mxu0 0.0
  %11683 = vmatprep.subr.mxu0 0.0
  %11684 = vmatpush1.msra.mxu0 0.0
  %11685 = vmatprep.subr.mxu0 0.0
  %11686 = vmatpush1.msra.mxu0 0.0
  %11687 = vmatprep.subr.mxu0 0.0
  %11688 = vmatpush1.msra.mxu0 0.0
  %11689 = vmatprep.subr.mxu0 0.0
  %11690 = vmatpush1.msra.mxu0 0.0
  %11691 = vmatprep.subr.mxu0 0.0
  %11692 = vmatpush1.msra.mxu0 0.0
  %11693 = vmatprep.subr.mxu0 0.0
  %11694 = vmatpush1.msra.mxu0 0.0
  %11695 = vmatprep.subr.mxu0 0.0
  %11696 = vmatpush1.msra.mxu0 0.0
  %11697 = vmatprep.mubr.f32.mxu0 0.0
  %11698 = vmatmul.mubr.f32.gmra.mrb[0].mxu0 %v11628
  %v11699 = vpop.f32.mrb[0].mxu0
  %v11700 = vadd.f32 0.0, %v11699
  %v11701 = vpop.f32.mrb[0].mxu0
  %11702 = vmatprep.mubr.f32.mxu0 0.0
  %11703 = vmatmul.mubr.f32.gmra.mrb[0].mxu0 %v11631
  %v11704 = vpop.f32.mrb[0].mxu0
  %v11705 = vadd.f32 0.0, %v11704
  %v11706 = vpop.f32.mrb[0].mxu0
  %11707 = vdwg.mxu0
  %v11709 = vsel %vm5533, %v9825, 0
  %v11712 = vsel %vm5533, %v9830, 0
  %11714 = vmatprep.subr.mxu0 0.0
  %11715 = vmatpush1.msra.mxu0 %v95
  %11716 = vmatprep.subr.mxu0 0.0
  %11717 = vmatpush1.msra.mxu0 0.0
  %11718 = vmatprep.subr.mxu0 0.0
  %11719 = vmatpush1.msra.mxu0 0.0
  %11720 = vmatprep.subr.mxu0 0.0
  %11721 = vmatpush1.msra.mxu0 0.0
  %11722 = vmatprep.subr.mxu0 0.0
  %11723 = vmatpush1.msra.mxu0 0.0
  %11724 = vmatprep.subr.mxu0 0.0
  %11725 = vmatpush1.msra.mxu0 0.0
  %11726 = vmatprep.subr.mxu0 0.0
  %11727 = vmatpush1.msra.mxu0 0.0
  %11728 = vmatprep.subr.mxu0 0.0
  %11729 = vmatpush1.msra.mxu0 0.0
  %11730 = vmatprep.subr.mxu0 0.0
  %11731 = vmatpush1.msra.mxu0 0.0
  %11732 = vmatprep.subr.mxu0 0.0
  %11733 = vmatpush1.msra.mxu0 0.0
  %11734 = vmatprep.subr.mxu0 0.0
  %11735 = vmatpush1.msra.mxu0 0.0
  %11736 = vmatprep.subr.mxu0 0.0
  %11737 = vmatpush1.msra.mxu0 0.0
  %11738 = vmatprep.subr.mxu0 0.0
  %11739 = vmatpush1.msra.mxu0 0.0
  %11740 = vmatprep.subr.mxu0 0.0
  %11741 = vmatpush1.msra.mxu0 0.0
  %11742 = vmatprep.subr.mxu0 0.0
  %11743 = vmatpush1.msra.mxu0 0.0
  %11744 = vmatprep.subr.mxu0 0.0
  %11745 = vmatpush1.msra.mxu0 0.0
  %11746 = vmatprep.subr.mxu0 0.0
  %11747 = vmatpush1.msra.mxu0 0.0
  %11748 = vmatprep.subr.mxu0 0.0
  %11749 = vmatpush1.msra.mxu0 0.0
  %11750 = vmatprep.subr.mxu0 0.0
  %11751 = vmatpush1.msra.mxu0 0.0
  %11752 = vmatprep.subr.mxu0 0.0
  %11753 = vmatpush1.msra.mxu0 0.0
  %11754 = vmatprep.subr.mxu0 0.0
  %11755 = vmatpush1.msra.mxu0 0.0
  %11756 = vmatprep.subr.mxu0 0.0
  %11757 = vmatpush1.msra.mxu0 0.0
  %11758 = vmatprep.subr.mxu0 0.0
  %11759 = vmatpush1.msra.mxu0 0.0
  %11760 = vmatprep.subr.mxu0 0.0
  %11761 = vmatpush1.msra.mxu0 0.0
  %11762 = vmatprep.subr.mxu0 0.0
  %11763 = vmatpush1.msra.mxu0 0.0
  %11764 = vmatprep.subr.mxu0 0.0
  %11765 = vmatpush1.msra.mxu0 0.0
  %11766 = vmatprep.subr.mxu0 0.0
  %11767 = vmatpush1.msra.mxu0 0.0
  %11768 = vmatprep.subr.mxu0 0.0
  %11769 = vmatpush1.msra.mxu0 0.0
  %11770 = vmatprep.subr.mxu0 0.0
  %11771 = vmatpush1.msra.mxu0 0.0
  %11772 = vmatprep.subr.mxu0 0.0
  %11773 = vmatpush1.msra.mxu0 0.0
  %11774 = vmatprep.subr.mxu0 0.0
  %11775 = vmatpush1.msra.mxu0 0.0
  %11776 = vmatprep.subr.mxu0 0.0
  %11777 = vmatpush1.msra.mxu0 0.0
  %11778 = vmatprep.mubr.f32.mxu0 0.0
  %11779 = vmatmul.mubr.f32.gmra.mrb[0].mxu0 %v11709
  %v11780 = vpop.f32.mrb[0].mxu0
  %v11781 = vadd.f32 0.0, %v11780
  %v11782 = vpop.f32.mrb[0].mxu0
  %11783 = vmatprep.mubr.f32.mxu0 0.0
  %11784 = vmatmul.mubr.f32.gmra.mrb[0].mxu0 %v11712
  %v11785 = vpop.f32.mrb[0].mxu0
  %v11786 = vadd.f32 0.0, %v11785
  %v11787 = vpop.f32.mrb[0].mxu0
  %11788 = vdwg.mxu0
  %v11790 = vsel %vm5533, %v9909, 0
  %v11793 = vsel %vm5533, %v9914, 0
  %11795 = vmatprep.subr.mxu0 0.0
  %11796 = vmatpush1.msra.mxu0 %v95
  %11797 = vmatprep.subr.mxu0 0.0
  %11798 = vmatpush1.msra.mxu0 0.0
  %11799 = vmatprep.subr.mxu0 0.0
  %11800 = vmatpush1.msra.mxu0 0.0
  %11801 = vmatprep.subr.mxu0 0.0
  %11802 = vmatpush1.msra.mxu0 0.0
  %11803 = vmatprep.subr.mxu0 0.0
  %11804 = vmatpush1.msra.mxu0 0.0
  %11805 = vmatprep.subr.mxu0 0.0
  %11806 = vmatpush1.msra.mxu0 0.0
  %11807 = vmatprep.subr.mxu0 0.0
  %11808 = vmatpush1.msra.mxu0 0.0
  %11809 = vmatprep.subr.mxu0 0.0
  %11810 = vmatpush1.msra.mxu0 0.0
  %11811 = vmatprep.subr.mxu0 0.0
  %11812 = vmatpush1.msra.mxu0 0.0
  %11813 = vmatprep.subr.mxu0 0.0
  %11814 = vmatpush1.msra.mxu0 0.0
  %11815 = vmatprep.subr.mxu0 0.0
  %11816 = vmatpush1.msra.mxu0 0.0
  %11817 = vmatprep.subr.mxu0 0.0
  %11818 = vmatpush1.msra.mxu0 0.0
  %11819 = vmatprep.subr.mxu0 0.0
  %11820 = vmatpush1.msra.mxu0 0.0
  %11821 = vmatprep.subr.mxu0 0.0
  %11822 = vmatpush1.msra.mxu0 0.0
  %11823 = vmatprep.subr.mxu0 0.0
  %11824 = vmatpush1.msra.mxu0 0.0
  %11825 = vmatprep.subr.mxu0 0.0
  %11826 = vmatpush1.msra.mxu0 0.0
  %11827 = vmatprep.subr.mxu0 0.0
  %11828 = vmatpush1.msra.mxu0 0.0
  %11829 = vmatprep.subr.mxu0 0.0
  %11830 = vmatpush1.msra.mxu0 0.0
  %11831 = vmatprep.subr.mxu0 0.0
  %11832 = vmatpush1.msra.mxu0 0.0
  %11833 = vmatprep.subr.mxu0 0.0
  %11834 = vmatpush1.msra.mxu0 0.0
  %11835 = vmatprep.subr.mxu0 0.0
  %11836 = vmatpush1.msra.mxu0 0.0
  %11837 = vmatprep.subr.mxu0 0.0
  %11838 = vmatpush1.msra.mxu0 0.0
  %11839 = vmatprep.subr.mxu0 0.0
  %11840 = vmatpush1.msra.mxu0 0.0
  %11841 = vmatprep.subr.mxu0 0.0
  %11842 = vmatpush1.msra.mxu0 0.0
  %11843 = vmatprep.subr.mxu0 0.0
  %11844 = vmatpush1.msra.mxu0 0.0
  %11845 = vmatprep.subr.mxu0 0.0
  %11846 = vmatpush1.msra.mxu0 0.0
  %11847 = vmatprep.subr.mxu0 0.0
  %11848 = vmatpush1.msra.mxu0 0.0
  %11849 = vmatprep.subr.mxu0 0.0
  %11850 = vmatpush1.msra.mxu0 0.0
  %11851 = vmatprep.subr.mxu0 0.0
  %11852 = vmatpush1.msra.mxu0 0.0
  %11853 = vmatprep.subr.mxu0 0.0
  %11854 = vmatpush1.msra.mxu0 0.0
  %11855 = vmatprep.subr.mxu0 0.0
  %11856 = vmatpush1.msra.mxu0 0.0
  %11857 = vmatprep.subr.mxu0 0.0
  %11858 = vmatpush1.msra.mxu0 0.0
  %11859 = vmatprep.mubr.f32.mxu0 0.0
  %11860 = vmatmul.mubr.f32.gmra.mrb[0].mxu0 %v11790
  %v11861 = vpop.f32.mrb[0].mxu0
  %v11862 = vadd.f32 0.0, %v11861
  %v11863 = vpop.f32.mrb[0].mxu0
  %11864 = vmatprep.mubr.f32.mxu0 0.0
  %11865 = vmatmul.mubr.f32.gmra.mrb[0].mxu0 %v11793
  %v11866 = vpop.f32.mrb[0].mxu0
  %v11867 = vadd.f32 0.0, %v11866
  %v11868 = vpop.f32.mrb[0].mxu0
  %11869 = vdwg.mxu0
  %v11871 = vsel %vm5533, %v9993, 0
  %v11874 = vsel %vm5533, %v9998, 0
  %11876 = vmatprep.subr.mxu0 0.0
  %11877 = vmatpush1.msra.mxu0 %v95
  %11878 = vmatprep.subr.mxu0 0.0
  %11879 = vmatpush1.msra.mxu0 0.0
  %11880 = vmatprep.subr.mxu0 0.0
  %11881 = vmatpush1.msra.mxu0 0.0
  %11882 = vmatprep.subr.mxu0 0.0
  %11883 = vmatpush1.msra.mxu0 0.0
  %11884 = vmatprep.subr.mxu0 0.0
  %11885 = vmatpush1.msra.mxu0 0.0
  %11886 = vmatprep.subr.mxu0 0.0
  %11887 = vmatpush1.msra.mxu0 0.0
  %11888 = vmatprep.subr.mxu0 0.0
  %11889 = vmatpush1.msra.mxu0 0.0
  %11890 = vmatprep.subr.mxu0 0.0
  %11891 = vmatpush1.msra.mxu0 0.0
  %11892 = vmatprep.subr.mxu0 0.0
  %11893 = vmatpush1.msra.mxu0 0.0
  %11894 = vmatprep.subr.mxu0 0.0
  %11895 = vmatpush1.msra.mxu0 0.0
  %11896 = vmatprep.subr.mxu0 0.0
  %11897 = vmatpush1.msra.mxu0 0.0
  %11898 = vmatprep.subr.mxu0 0.0
  %11899 = vmatpush1.msra.mxu0 0.0
  %11900 = vmatprep.subr.mxu0 0.0
  %11901 = vmatpush1.msra.mxu0 0.0
  %11902 = vmatprep.subr.mxu0 0.0
  %11903 = vmatpush1.msra.mxu0 0.0
  %11904 = vmatprep.subr.mxu0 0.0
  %11905 = vmatpush1.msra.mxu0 0.0
  %11906 = vmatprep.subr.mxu0 0.0
  %11907 = vmatpush1.msra.mxu0 0.0
  %11908 = vmatprep.subr.mxu0 0.0
  %11909 = vmatpush1.msra.mxu0 0.0
  %11910 = vmatprep.subr.mxu0 0.0
  %11911 = vmatpush1.msra.mxu0 0.0
  %11912 = vmatprep.subr.mxu0 0.0
  %11913 = vmatpush1.msra.mxu0 0.0
  %11914 = vmatprep.subr.mxu0 0.0
  %11915 = vmatpush1.msra.mxu0 0.0
  %11916 = vmatprep.subr.mxu0 0.0
  %11917 = vmatpush1.msra.mxu0 0.0
  %11918 = vmatprep.subr.mxu0 0.0
  %11919 = vmatpush1.msra.mxu0 0.0
  %11920 = vmatprep.subr.mxu0 0.0
  %11921 = vmatpush1.msra.mxu0 0.0
  %11922 = vmatprep.subr.mxu0 0.0
  %11923 = vmatpush1.msra.mxu0 0.0
  %11924 = vmatprep.subr.mxu0 0.0
  %11925 = vmatpush1.msra.mxu0 0.0
  %11926 = vmatprep.subr.mxu0 0.0
  %11927 = vmatpush1.msra.mxu0 0.0
  %11928 = vmatprep.subr.mxu0 0.0
  %11929 = vmatpush1.msra.mxu0 0.0
  %11930 = vmatprep.subr.mxu0 0.0
  %11931 = vmatpush1.msra.mxu0 0.0
  %11932 = vmatprep.subr.mxu0 0.0
  %11933 = vmatpush1.msra.mxu0 0.0
  %11934 = vmatprep.subr.mxu0 0.0
  %11935 = vmatpush1.msra.mxu0 0.0
  %11936 = vmatprep.subr.mxu0 0.0
  %11937 = vmatpush1.msra.mxu0 0.0
  %11938 = vmatprep.subr.mxu0 0.0
  %11939 = vmatpush1.msra.mxu0 0.0
  %11940 = vmatprep.mubr.f32.mxu0 0.0
  %11941 = vmatmul.mubr.f32.gmra.mrb[0].mxu0 %v11871
  %v11942 = vpop.f32.mrb[0].mxu0
  %v11943 = vadd.f32 0.0, %v11942
  %v11944 = vpop.f32.mrb[0].mxu0
  %11945 = vmatprep.mubr.f32.mxu0 0.0
  %11946 = vmatmul.mubr.f32.gmra.mrb[0].mxu0 %v11874
  %v11947 = vpop.f32.mrb[0].mxu0
  %v11948 = vadd.f32 0.0, %v11947
  %v11949 = vpop.f32.mrb[0].mxu0
  %11950 = vdwg.mxu0
  %v11952 = vsel %vm5533, %v10077, 0
  %v11955 = vsel %vm5533, %v10082, 0
  %11957 = vmatprep.subr.mxu0 0.0
  %11958 = vmatpush1.msra.mxu0 %v95
  %11959 = vmatprep.subr.mxu0 0.0
  %11960 = vmatpush1.msra.mxu0 0.0
  %11961 = vmatprep.subr.mxu0 0.0
  %11962 = vmatpush1.msra.mxu0 0.0
  %11963 = vmatprep.subr.mxu0 0.0
  %11964 = vmatpush1.msra.mxu0 0.0
  %11965 = vmatprep.subr.mxu0 0.0
  %11966 = vmatpush1.msra.mxu0 0.0
  %11967 = vmatprep.subr.mxu0 0.0
  %11968 = vmatpush1.msra.mxu0 0.0
  %11969 = vmatprep.subr.mxu0 0.0
  %11970 = vmatpush1.msra.mxu0 0.0
  %11971 = vmatprep.subr.mxu0 0.0
  %11972 = vmatpush1.msra.mxu0 0.0
  %11973 = vmatprep.subr.mxu0 0.0
  %11974 = vmatpush1.msra.mxu0 0.0
  %11975 = vmatprep.subr.mxu0 0.0
  %11976 = vmatpush1.msra.mxu0 0.0
  %11977 = vmatprep.subr.mxu0 0.0
  %11978 = vmatpush1.msra.mxu0 0.0
  %11979 = vmatprep.subr.mxu0 0.0
  %11980 = vmatpush1.msra.mxu0 0.0
  %11981 = vmatprep.subr.mxu0 0.0
  %11982 = vmatpush1.msra.mxu0 0.0
  %11983 = vmatprep.subr.mxu0 0.0
  %11984 = vmatpush1.msra.mxu0 0.0
  %11985 = vmatprep.subr.mxu0 0.0
  %11986 = vmatpush1.msra.mxu0 0.0
  %11987 = vmatprep.subr.mxu0 0.0
  %11988 = vmatpush1.msra.mxu0 0.0
  %11989 = vmatprep.subr.mxu0 0.0
  %11990 = vmatpush1.msra.mxu0 0.0
  %11991 = vmatprep.subr.mxu0 0.0
  %11992 = vmatpush1.msra.mxu0 0.0
  %11993 = vmatprep.subr.mxu0 0.0
  %11994 = vmatpush1.msra.mxu0 0.0
  %11995 = vmatprep.subr.mxu0 0.0
  %11996 = vmatpush1.msra.mxu0 0.0
  %11997 = vmatprep.subr.mxu0 0.0
  %11998 = vmatpush1.msra.mxu0 0.0
  %11999 = vmatprep.subr.mxu0 0.0
  %12000 = vmatpush1.msra.mxu0 0.0
  %12001 = vmatprep.subr.mxu0 0.0
  %12002 = vmatpush1.msra.mxu0 0.0
  %12003 = vmatprep.subr.mxu0 0.0
  %12004 = vmatpush1.msra.mxu0 0.0
  %12005 = vmatprep.subr.mxu0 0.0
  %12006 = vmatpush1.msra.mxu0 0.0
  %12007 = vmatprep.subr.mxu0 0.0
  %12008 = vmatpush1.msra.mxu0 0.0
  %12009 = vmatprep.subr.mxu0 0.0
  %12010 = vmatpush1.msra.mxu0 0.0
  %12011 = vmatprep.subr.mxu0 0.0
  %12012 = vmatpush1.msra.mxu0 0.0
  %12013 = vmatprep.subr.mxu0 0.0
  %12014 = vmatpush1.msra.mxu0 0.0
  %12015 = vmatprep.subr.mxu0 0.0
  %12016 = vmatpush1.msra.mxu0 0.0
  %12017 = vmatprep.subr.mxu0 0.0
  %12018 = vmatpush1.msra.mxu0 0.0
  %12019 = vmatprep.subr.mxu0 0.0
  %12020 = vmatpush1.msra.mxu0 0.0
  %12021 = vmatprep.mubr.f32.mxu0 0.0
  %12022 = vmatmul.mubr.f32.gmra.mrb[0].mxu0 %v11952
  %v12023 = vpop.f32.mrb[0].mxu0
  %v12024 = vadd.f32 0.0, %v12023
  %v12025 = vpop.f32.mrb[0].mxu0
  %12026 = vmatprep.mubr.f32.mxu0 0.0
  %12027 = vmatmul.mubr.f32.gmra.mrb[0].mxu0 %v11955
  %v12028 = vpop.f32.mrb[0].mxu0
  %v12029 = vadd.f32 0.0, %v12028
  %v12030 = vpop.f32.mrb[0].mxu0
  %12031 = vdwg.mxu0
  %v12033 = vsel %vm5533, %v10161, 0
  %v12036 = vsel %vm5533, %v10166, 0
  %12038 = vmatprep.subr.mxu0 0.0
  %12039 = vmatpush1.msra.mxu0 %v95
  %12040 = vmatprep.subr.mxu0 0.0
  %12041 = vmatpush1.msra.mxu0 0.0
  %12042 = vmatprep.subr.mxu0 0.0
  %12043 = vmatpush1.msra.mxu0 0.0
  %12044 = vmatprep.subr.mxu0 0.0
  %12045 = vmatpush1.msra.mxu0 0.0
  %12046 = vmatprep.subr.mxu0 0.0
  %12047 = vmatpush1.msra.mxu0 0.0
  %12048 = vmatprep.subr.mxu0 0.0
  %12049 = vmatpush1.msra.mxu0 0.0
  %12050 = vmatprep.subr.mxu0 0.0
  %12051 = vmatpush1.msra.mxu0 0.0
  %12052 = vmatprep.subr.mxu0 0.0
  %12053 = vmatpush1.msra.mxu0 0.0
  %12054 = vmatprep.subr.mxu0 0.0
  %12055 = vmatpush1.msra.mxu0 0.0
  %12056 = vmatprep.subr.mxu0 0.0
  %12057 = vmatpush1.msra.mxu0 0.0
  %12058 = vmatprep.subr.mxu0 0.0
  %12059 = vmatpush1.msra.mxu0 0.0
  %12060 = vmatprep.subr.mxu0 0.0
  %12061 = vmatpush1.msra.mxu0 0.0
  %12062 = vmatprep.subr.mxu0 0.0
  %12063 = vmatpush1.msra.mxu0 0.0
  %12064 = vmatprep.subr.mxu0 0.0
  %12065 = vmatpush1.msra.mxu0 0.0
  %12066 = vmatprep.subr.mxu0 0.0
  %12067 = vmatpush1.msra.mxu0 0.0
  %12068 = vmatprep.subr.mxu0 0.0
  %12069 = vmatpush1.msra.mxu0 0.0
  %12070 = vmatprep.subr.mxu0 0.0
  %12071 = vmatpush1.msra.mxu0 0.0
  %12072 = vmatprep.subr.mxu0 0.0
  %12073 = vmatpush1.msra.mxu0 0.0
  %12074 = vmatprep.subr.mxu0 0.0
  %12075 = vmatpush1.msra.mxu0 0.0
  %12076 = vmatprep.subr.mxu0 0.0
  %12077 = vmatpush1.msra.mxu0 0.0
  %12078 = vmatprep.subr.mxu0 0.0
  %12079 = vmatpush1.msra.mxu0 0.0
  %12080 = vmatprep.subr.mxu0 0.0
  %12081 = vmatpush1.msra.mxu0 0.0
  %12082 = vmatprep.subr.mxu0 0.0
  %12083 = vmatpush1.msra.mxu0 0.0
  %12084 = vmatprep.subr.mxu0 0.0
  %12085 = vmatpush1.msra.mxu0 0.0
  %12086 = vmatprep.subr.mxu0 0.0
  %12087 = vmatpush1.msra.mxu0 0.0
  %12088 = vmatprep.subr.mxu0 0.0
  %12089 = vmatpush1.msra.mxu0 0.0
  %12090 = vmatprep.subr.mxu0 0.0
  %12091 = vmatpush1.msra.mxu0 0.0
  %12092 = vmatprep.subr.mxu0 0.0
  %12093 = vmatpush1.msra.mxu0 0.0
  %12094 = vmatprep.subr.mxu0 0.0
  %12095 = vmatpush1.msra.mxu0 0.0
  %12096 = vmatprep.subr.mxu0 0.0
  %12097 = vmatpush1.msra.mxu0 0.0
  %12098 = vmatprep.subr.mxu0 0.0
  %12099 = vmatpush1.msra.mxu0 0.0
  %12100 = vmatprep.subr.mxu0 0.0
  %12101 = vmatpush1.msra.mxu0 0.0
  %12102 = vmatprep.mubr.f32.mxu0 0.0
  %12103 = vmatmul.mubr.f32.gmra.mrb[0].mxu0 %v12033
  %v12104 = vpop.f32.mrb[0].mxu0
  %v12105 = vadd.f32 0.0, %v12104
  %v12106 = vpop.f32.mrb[0].mxu0
  %12107 = vmatprep.mubr.f32.mxu0 0.0
  %12108 = vmatmul.mubr.f32.gmra.mrb[0].mxu0 %v12036
  %v12109 = vpop.f32.mrb[0].mxu0
  %v12110 = vadd.f32 0.0, %v12109
  %v12111 = vpop.f32.mrb[0].mxu0
  %12112 = vdwg.mxu0
  %v12113 = vadd.f32 %v10242, %v10728
  %v12114 = vadd.f32 %v10247, %v10733
  %v12115 = vadd.f32 %v10323, %v10809
  %v12116 = vadd.f32 %v10328, %v10814
  %v12117 = vadd.f32 %v10404, %v10890
  %v12118 = vadd.f32 %v10409, %v10895
  %v12119 = vadd.f32 %v10485, %v10971
  %v12120 = vadd.f32 %v10490, %v10976
  %v12121 = vadd.f32 %v10566, %v11052
  %v12122 = vadd.f32 %v10571, %v11057
  %v12123 = vadd.f32 %v10647, %v11133
  %v12124 = vadd.f32 %v10652, %v11138
  %v12125 = vadd.f32 %v12113, %v11214
  %v12126 = vadd.f32 %v12114, %v11219
  %v12127 = vadd.f32 %v12115, %v11295
  %v12128 = vadd.f32 %v12116, %v11300
  %v12129 = vadd.f32 %v12117, %v11376
  %v12130 = vadd.f32 %v12118, %v11381
  %v12131 = vadd.f32 %v12119, %v11457
  %v12132 = vadd.f32 %v12120, %v11462
  %v12133 = vadd.f32 %v12121, %v11538
  %v12134 = vadd.f32 %v12122, %v11543
  %v12135 = vadd.f32 %v12123, %v11619
  %v12136 = vadd.f32 %v12124, %v11624
  %v12137 = vadd.f32 %v12125, %v11700
  %v12138 = vadd.f32 %v12126, %v11705
  %v12139 = vadd.f32 %v12127, %v11781
  %v12140 = vadd.f32 %v12128, %v11786
  %v12141 = vadd.f32 %v12129, %v11862
  %v12142 = vadd.f32 %v12130, %v11867
  %v12143 = vadd.f32 %v12131, %v11943
  %v12144 = vadd.f32 %v12132, %v11948
  %v12145 = vadd.f32 %v12133, %v12024
  %v12146 = vadd.f32 %v12134, %v12029
  %v12147 = vadd.f32 %v12135, %v12105
  %v12148 = vadd.f32 %v12136, %v12110
  %v12149 = vadd.f32 %v12137, %v32
  %v12150 = vadd.f32 %v12138, %v33
  %v12151 = vadd.f32 %v12139, %v34
  %v12152 = vadd.f32 %v12140, %v35
  %v12153 = vadd.f32 %v12141, %v36
  %v12154 = vadd.f32 %v12142, %v37
  %v12155 = vadd.f32 %v12143, %v38
  %v12156 = vadd.f32 %v12144, %v39
  %v12157 = vadd.f32 %v12145, %v40
  %v12158 = vadd.f32 %v12146, %v41
  %v12159 = vadd.f32 %v12147, %v42
  %v12160 = vadd.f32 %v12148, %v43
  %v12161 = vsel %vm96, %v12149, 0.0
  %12162 = vadd.xlane.f32.xlu0 %v12161
  %v12163 = vpop.xlane.xlu0 %12162
  %vm12164 = vcmask 257024
  %v12165 = vsel %vm12164, %v12150, 0.0
  %12166 = vadd.xlane.f32.xlu0 %v12165
  %v12167 = vpop.xlane.xlu0 %12166
  %v12168 = vsel %vm96, %v12151, 0.0
  %12169 = vadd.xlane.f32.xlu0 %v12168
  %v12170 = vpop.xlane.xlu0 %12169
  %v12171 = vsel %vm12164, %v12152, 0.0
  %12172 = vadd.xlane.f32.xlu0 %v12171
  %v12173 = vpop.xlane.xlu0 %12172
  %v12174 = vsel %vm96, %v12153, 0.0
  %12175 = vadd.xlane.f32.xlu0 %v12174
  %v12176 = vpop.xlane.xlu0 %12175
  %v12177 = vsel %vm12164, %v12154, 0.0
  %12178 = vadd.xlane.f32.xlu0 %v12177
  %v12179 = vpop.xlane.xlu0 %12178
  %v12180 = vsel %vm96, %v12155, 0.0
  %12181 = vadd.xlane.f32.xlu0 %v12180
  %v12182 = vpop.xlane.xlu0 %12181
  %v12183 = vsel %vm12164, %v12156, 0.0
  %12184 = vadd.xlane.f32.xlu0 %v12183
  %v12185 = vpop.xlane.xlu0 %12184
  %v12186 = vsel %vm96, %v12157, 0.0
  %12187 = vadd.xlane.f32.xlu0 %v12186
  %v12188 = vpop.xlane.xlu0 %12187
  %v12189 = vsel %vm12164, %v12158, 0.0
  %12190 = vadd.xlane.f32.xlu0 %v12189
  %v12191 = vpop.xlane.xlu0 %12190
  %v12192 = vsel %vm96, %v12159, 0.0
  %12193 = vadd.xlane.f32.xlu0 %v12192
  %v12194 = vpop.xlane.xlu0 %12193
  %v12195 = vsel %vm12164, %v12160, 0.0
  %12196 = vadd.xlane.f32.xlu0 %v12195
  %v12197 = vpop.xlane.xlu0 %12196
  %v12198 = vrcp.pop 32.0
  %v12199 = vmul.f32 %v12163, %v12198
  %v12200 = vmul.f32 %v12167, %v12198
  %v12201 = vmul.f32 %v12170, %v12198
  %v12202 = vmul.f32 %v12173, %v12198
  %v12203 = vmul.f32 %v12176, %v12198
  %v12204 = vmul.f32 %v12179, %v12198
  %v12205 = vmul.f32 %v12182, %v12198
  %v12206 = vmul.f32 %v12185, %v12198
  %v12207 = vmul.f32 %v12188, %v12198
  %v12208 = vmul.f32 %v12191, %v12198
  %v12209 = vmul.f32 %v12194, %v12198
  %v12210 = vmul.f32 %v12197, %v12198
  %v12211 = vsub.f32 %v12149, %v12199
  %v12212 = vsub.f32 %v12150, %v12200
  %v12213 = vsub.f32 %v12151, %v12201
  %v12214 = vsub.f32 %v12152, %v12202
  %v12215 = vsub.f32 %v12153, %v12203
  %v12216 = vsub.f32 %v12154, %v12204
  %v12217 = vsub.f32 %v12155, %v12205
  %v12218 = vsub.f32 %v12156, %v12206
  %v12219 = vsub.f32 %v12157, %v12207
  %v12220 = vsub.f32 %v12158, %v12208
  %v12221 = vsub.f32 %v12159, %v12209
  %v12222 = vsub.f32 %v12160, %v12210
  %v12223 = vmul.f32 %v12211, %v12211
  %v12224 = vmul.f32 %v12212, %v12212
  %v12225 = vmul.f32 %v12213, %v12213
  %v12226 = vmul.f32 %v12214, %v12214
  %v12227 = vmul.f32 %v12215, %v12215
  %v12228 = vmul.f32 %v12216, %v12216
  %v12229 = vmul.f32 %v12217, %v12217
  %v12230 = vmul.f32 %v12218, %v12218
  %v12231 = vmul.f32 %v12219, %v12219
  %v12232 = vmul.f32 %v12220, %v12220
  %v12233 = vmul.f32 %v12221, %v12221
  %v12234 = vmul.f32 %v12222, %v12222
  %v12235 = vsel %vm96, %v12223, 0.0
  %12236 = vadd.xlane.f32.xlu0 %v12235
  %v12237 = vpop.xlane.xlu0 %12236
  %v12238 = vsel %vm12164, %v12224, 0.0
  %12239 = vadd.xlane.f32.xlu0 %v12238
  %v12240 = vpop.xlane.xlu0 %12239
  %v12241 = vsel %vm96, %v12225, 0.0
  %12242 = vadd.xlane.f32.xlu0 %v12241
  %v12243 = vpop.xlane.xlu0 %12242
  %v12244 = vsel %vm12164, %v12226, 0.0
  %12245 = vadd.xlane.f32.xlu0 %v12244
  %v12246 = vpop.xlane.xlu0 %12245
  %v12247 = vsel %vm96, %v12227, 0.0
  %12248 = vadd.xlane.f32.xlu0 %v12247
  %v12249 = vpop.xlane.xlu0 %12248
  %v12250 = vsel %vm12164, %v12228, 0.0
  %12251 = vadd.xlane.f32.xlu0 %v12250
  %v12252 = vpop.xlane.xlu0 %12251
  %v12253 = vsel %vm96, %v12229, 0.0
  %12254 = vadd.xlane.f32.xlu0 %v12253
  %v12255 = vpop.xlane.xlu0 %12254
  %v12256 = vsel %vm12164, %v12230, 0.0
  %12257 = vadd.xlane.f32.xlu0 %v12256
  %v12258 = vpop.xlane.xlu0 %12257
  %v12259 = vsel %vm96, %v12231, 0.0
  %12260 = vadd.xlane.f32.xlu0 %v12259
  %v12261 = vpop.xlane.xlu0 %12260
  %v12262 = vsel %vm12164, %v12232, 0.0
  %12263 = vadd.xlane.f32.xlu0 %v12262
  %v12264 = vpop.xlane.xlu0 %12263
  %v12265 = vsel %vm96, %v12233, 0.0
  %12266 = vadd.xlane.f32.xlu0 %v12265
  %v12267 = vpop.xlane.xlu0 %12266
  %v12268 = vsel %vm12164, %v12234, 0.0
  %12269 = vadd.xlane.f32.xlu0 %v12268
  %v12270 = vpop.xlane.xlu0 %12269
  %v12271 = vmul.f32 %v12237, %v12198
  %v12272 = vmul.f32 %v12240, %v12198
  %v12273 = vmul.f32 %v12243, %v12198
  %v12274 = vmul.f32 %v12246, %v12198
  %v12275 = vmul.f32 %v12249, %v12198
  %v12276 = vmul.f32 %v12252, %v12198
  %v12277 = vmul.f32 %v12255, %v12198
  %v12278 = vmul.f32 %v12258, %v12198
  %v12279 = vmul.f32 %v12261, %v12198
  %v12280 = vmul.f32 %v12264, %v12198
  %v12281 = vmul.f32 %v12267, %v12198
  %v12282 = vmul.f32 %v12270, %v12198
  %v12283 = vadd.f32 %v12271, 1e-05
  %v12284 = vadd.f32 %v12272, 1e-05
  %v12285 = vadd.f32 %v12273, 1e-05
  %v12286 = vadd.f32 %v12274, 1e-05
  %v12287 = vadd.f32 %v12275, 1e-05
  %v12288 = vadd.f32 %v12276, 1e-05
  %v12289 = vadd.f32 %v12277, 1e-05
  %v12290 = vadd.f32 %v12278, 1e-05
  %v12291 = vadd.f32 %v12279, 1e-05
  %v12292 = vadd.f32 %v12280, 1e-05
  %v12293 = vadd.f32 %v12281, 1e-05
  %v12294 = vadd.f32 %v12282, 1e-05
  %v12295 = vrsqrt.pop %v12283
  %v12296 = vrsqrt.pop %v12284
  %v12297 = vrsqrt.pop %v12285
  %v12298 = vrsqrt.pop %v12286
  %v12299 = vrsqrt.pop %v12287
  %v12300 = vrsqrt.pop %v12288
  %v12301 = vrsqrt.pop %v12289
  %v12302 = vrsqrt.pop %v12290
  %v12303 = vrsqrt.pop %v12291
  %v12304 = vrsqrt.pop %v12292
  %v12305 = vrsqrt.pop %v12293
  %v12306 = vrsqrt.pop %v12294
  %v12307 = vmul.f32 %v12211, %v12295
  %v12308 = vmul.f32 %v12212, %v12296
  %v12309 = vmul.f32 %v12213, %v12297
  %v12310 = vmul.f32 %v12214, %v12298
  %v12311 = vmul.f32 %v12215, %v12299
  %v12312 = vmul.f32 %v12216, %v12300
  %v12313 = vmul.f32 %v12217, %v12301
  %v12314 = vmul.f32 %v12218, %v12302
  %v12315 = vmul.f32 %v12219, %v12303
  %v12316 = vmul.f32 %v12220, %v12304
  %v12317 = vmul.f32 %v12221, %v12305
  %v12318 = vmul.f32 %v12222, %v12306
  %v12319 = vld [vmem:[%s5] sm:$0x1]
  %v12321 = vlaneseq
  %v12322 = vshrl.u32 %v12321, 7
  %v12323 = vsub.s32 0, %v12322
  %v12324 = vrot.slane %v12319, %v12323
  %v12326 = vmul.f32 %v12307, %v12324
  %v12327 = vmul.f32 %v12308, %v12324
  %v12328 = vmul.f32 %v12309, %v12324
  %v12329 = vmul.f32 %v12310, %v12324
  %v12330 = vmul.f32 %v12311, %v12324
  %v12331 = vmul.f32 %v12312, %v12324
  %v12332 = vmul.f32 %v12313, %v12324
  %v12333 = vmul.f32 %v12314, %v12324
  %v12334 = vmul.f32 %v12315, %v12324
  %v12335 = vmul.f32 %v12316, %v12324
  %v12336 = vmul.f32 %v12317, %v12324
  %v12337 = vmul.f32 %v12318, %v12324
  %v12338 = vld [vmem:[%s6] sm:$0x1]
  %v12340 = vlaneseq
  %v12341 = vshrl.u32 %v12340, 7
  %v12342 = vsub.s32 0, %v12341
  %v12343 = vrot.slane %v12338, %v12342
  %v12345 = vadd.f32 %v12326, %v12343
  %v12346 = vadd.f32 %v12327, %v12343
  %v12347 = vadd.f32 %v12328, %v12343
  %v12348 = vadd.f32 %v12329, %v12343
  %v12349 = vadd.f32 %v12330, %v12343
  %v12350 = vadd.f32 %v12331, %v12343
  %v12351 = vadd.f32 %v12332, %v12343
  %v12352 = vadd.f32 %v12333, %v12343
  %v12353 = vadd.f32 %v12334, %v12343
  %v12354 = vadd.f32 %v12335, %v12343
  %v12355 = vadd.f32 %v12336, %v12343
  %v12356 = vadd.f32 %v12337, %v12343
  %12357 = vst.msk [vmem:[#allocation2] sm:$0xff] %vm96, %v12345
  %12358 = vst.msk [vmem:[#allocation2 + $0x8] sm:$0xf] %vm12164, %v12346
  %12359 = vst.msk [vmem:[#allocation2 + $0x10] sm:$0xff] %vm96, %v12347
  %12360 = vst.msk [vmem:[#allocation2 + $0x18] sm:$0xf] %vm12164, %v12348
  %12361 = vst.msk [vmem:[#allocation2 + $0x20] sm:$0xff] %vm96, %v12349
  %12362 = vst.msk [vmem:[#allocation2 + $0x28] sm:$0xf] %vm12164, %v12350
  %12363 = vst.msk [vmem:[#allocation2 + $0x30] sm:$0xff] %vm96, %v12351
  %12364 = vst.msk [vmem:[#allocation2 + $0x38] sm:$0xf] %vm12164, %v12352
  %12365 = vst.msk [vmem:[#allocation2 + $0x40] sm:$0xff] %vm96, %v12353
  %12366 = vst.msk [vmem:[#allocation2 + $0x48] sm:$0xf] %vm12164, %v12354
  %12367 = vst.msk [vmem:[#allocation2 + $0x50] sm:$0xff] %vm96, %v12355
  %12368 = vst.msk [vmem:[#allocation2 + $0x58] sm:$0xf] %vm12164, %v12356
  %v12369 = vld [vmem:[#allocation2] sm:$0x1]
  %v12370 = vld [vmem:[#allocation2 + $0x10] sm:$0x1]
  %v12371 = vld [vmem:[#allocation2 + $0x20] sm:$0x1]
  %v12372 = vld [vmem:[#allocation2 + $0x30] sm:$0x1]
  %v12373 = vld [vmem:[#allocation2 + $0x40] sm:$0x1]
  %v12374 = vld [vmem:[#allocation2 + $0x50] sm:$0x1]
  %v12375 = vld [vmem:[%s7] sm:$0xff]
  %v12376 = vld [vmem:[%s7 + $0x8] sm:$0xff]
  %v12377 = vld [vmem:[%s7 + $0x10] sm:$0xff]
  %v12378 = vld [vmem:[%s7 + $0x18] sm:$0xff]
  %v12379 = vld [vmem:[#allocation2 + $0x1] sm:$0x1]
  %v12380 = vld [vmem:[#allocation2 + $0x11] sm:$0x1]
  %v12381 = vld [vmem:[#allocation2 + $0x21] sm:$0x1]
  %v12382 = vld [vmem:[#allocation2 + $0x31] sm:$0x1]
  %v12383 = vld [vmem:[#allocation2 + $0x41] sm:$0x1]
  %v12384 = vld [vmem:[#allocation2 + $0x51] sm:$0x1]
  %s12385 = scalar_lea.vmem %s7, 32
  %v12386 = vld [vmem:[%s12385] sm:$0xff]
  %v12387 = vld [vmem:[%s12385 + $0x8] sm:$0xff]
  %v12388 = vld [vmem:[%s12385 + $0x10] sm:$0xff]
  %v12389 = vld [vmem:[%s12385 + $0x18] sm:$0xff]
  %v12396 = vrot.slane %v12380, 7
  %vm12397 = vcmask 1041409
  %v12398 = vsel %vm12397, %v12396, %v12379
  %v12399 = vrot.slane %v12381, 6
  %vm12400 = vcmask 1042434
  %v12401 = vsel %vm12400, %v12399, %v12398
  %v12402 = vrot.slane %v12382, 5
  %vm12403 = vcmask 1043459
  %v12404 = vsel %vm12403, %v12402, %v12401
  %v12405 = vrot.slane %v12383, 4
  %vm12406 = vcmask 1044484
  %v12407 = vsel %vm12406, %v12405, %v12404
  %v12408 = vrot.slane %v12384, 3
  %vm12409 = vcmask 1045509
  %v12410 = vsel %vm12409, %v12408, %v12407
  %v12411 = vsel %vm96, %v12410, 0
  %12413 = vmatprep.subr.mxu0 0.0
  %12414 = vmatpush1.msra.mxu0 %v12386
  %12415 = vmatprep.subr.mxu0 0.0
  %12416 = vmatpush1.msra.mxu0 %v12387
  %12417 = vmatprep.subr.mxu0 0.0
  %12418 = vmatpush1.msra.mxu0 %v12388
  %12419 = vmatprep.subr.mxu0 0.0
  %12420 = vmatpush1.msra.mxu0 %v12389
  %12421 = vmatprep.subr.mxu0 0.0
  %12422 = vmatpush1.msra.mxu0 0.0
  %12423 = vmatprep.subr.mxu0 0.0
  %12424 = vmatpush1.msra.mxu0 0.0
  %12425 = vmatprep.subr.mxu0 0.0
  %12426 = vmatpush1.msra.mxu0 0.0
  %12427 = vmatprep.subr.mxu0 0.0
  %12428 = vmatpush1.msra.mxu0 0.0
  %12429 = vmatprep.subr.mxu0 0.0
  %12430 = vmatpush1.msra.mxu0 0.0
  %12431 = vmatprep.subr.mxu0 0.0
  %12432 = vmatpush1.msra.mxu0 0.0
  %12433 = vmatprep.subr.mxu0 0.0
  %12434 = vmatpush1.msra.mxu0 0.0
  %12435 = vmatprep.subr.mxu0 0.0
  %12436 = vmatpush1.msra.mxu0 0.0
  %12437 = vmatprep.subr.mxu0 0.0
  %12438 = vmatpush1.msra.mxu0 0.0
  %12439 = vmatprep.subr.mxu0 0.0
  %12440 = vmatpush1.msra.mxu0 0.0
  %12441 = vmatprep.subr.mxu0 0.0
  %12442 = vmatpush1.msra.mxu0 0.0
  %12443 = vmatprep.subr.mxu0 0.0
  %12444 = vmatpush1.msra.mxu0 0.0
  %12445 = vmatprep.subr.mxu0 0.0
  %12446 = vmatpush1.msra.mxu0 0.0
  %12447 = vmatprep.subr.mxu0 0.0
  %12448 = vmatpush1.msra.mxu0 0.0
  %12449 = vmatprep.subr.mxu0 0.0
  %12450 = vmatpush1.msra.mxu0 0.0
  %12451 = vmatprep.subr.mxu0 0.0
  %12452 = vmatpush1.msra.mxu0 0.0
  %12453 = vmatprep.subr.mxu0 0.0
  %12454 = vmatpush1.msra.mxu0 0.0
  %12455 = vmatprep.subr.mxu0 0.0
  %12456 = vmatpush1.msra.mxu0 0.0
  %12457 = vmatprep.subr.mxu0 0.0
  %12458 = vmatpush1.msra.mxu0 0.0
  %12459 = vmatprep.subr.mxu0 0.0
  %12460 = vmatpush1.msra.mxu0 0.0
  %12461 = vmatprep.subr.mxu0 0.0
  %12462 = vmatpush1.msra.mxu0 0.0
  %12463 = vmatprep.subr.mxu0 0.0
  %12464 = vmatpush1.msra.mxu0 0.0
  %12465 = vmatprep.subr.mxu0 0.0
  %12466 = vmatpush1.msra.mxu0 0.0
  %12467 = vmatprep.subr.mxu0 0.0
  %12468 = vmatpush1.msra.mxu0 0.0
  %12469 = vmatprep.subr.mxu0 0.0
  %12470 = vmatpush1.msra.mxu0 0.0
  %12471 = vmatprep.subr.mxu0 0.0
  %12472 = vmatpush1.msra.mxu0 0.0
  %12473 = vmatprep.subr.mxu0 0.0
  %12474 = vmatpush1.msra.mxu0 0.0
  %12475 = vmatprep.subr.mxu0 0.0
  %12476 = vmatpush1.msra.mxu0 0.0
  %12477 = vmatprep.mubr.f32.mxu0 0.0
  %12478 = vmatmul.mubr.f32.gmra.mrb[0].mxu0 %v12411
  %v12479 = vpop.f32.mrb[0].mxu0
  %v12480 = vadd.f32 0.0, %v12479
  %v12481 = vpop.f32.mrb[0].mxu0
  %12482 = vdwg.mxu0
  %v12489 = vrot.slane %v12370, 7
  %v12490 = vsel %vm12397, %v12489, %v12369
  %v12491 = vrot.slane %v12371, 6
  %v12492 = vsel %vm12400, %v12491, %v12490
  %v12493 = vrot.slane %v12372, 5
  %v12494 = vsel %vm12403, %v12493, %v12492
  %v12495 = vrot.slane %v12373, 4
  %v12496 = vsel %vm12406, %v12495, %v12494
  %v12497 = vrot.slane %v12374, 3
  %v12498 = vsel %vm12409, %v12497, %v12496
  %v12499 = vsel %vm96, %v12498, 0
  %12501 = vmatprep.subr.mxu0 0.0
  %12502 = vmatpush1.msra.mxu0 %v12375
  %12503 = vmatprep.subr.mxu0 0.0
  %12504 = vmatpush1.msra.mxu0 %v12376
  %12505 = vmatprep.subr.mxu0 0.0
  %12506 = vmatpush1.msra.mxu0 %v12377
  %12507 = vmatprep.subr.mxu0 0.0
  %12508 = vmatpush1.msra.mxu0 %v12378
  %12509 = vmatprep.subr.mxu0 0.0
  %12510 = vmatpush1.msra.mxu0 0.0
  %12511 = vmatprep.subr.mxu0 0.0
  %12512 = vmatpush1.msra.mxu0 0.0
  %12513 = vmatprep.subr.mxu0 0.0
  %12514 = vmatpush1.msra.mxu0 0.0
  %12515 = vmatprep.subr.mxu0 0.0
  %12516 = vmatpush1.msra.mxu0 0.0
  %12517 = vmatprep.subr.mxu0 0.0
  %12518 = vmatpush1.msra.mxu0 0.0
  %12519 = vmatprep.subr.mxu0 0.0
  %12520 = vmatpush1.msra.mxu0 0.0
  %12521 = vmatprep.subr.mxu0 0.0
  %12522 = vmatpush1.msra.mxu0 0.0
  %12523 = vmatprep.subr.mxu0 0.0
  %12524 = vmatpush1.msra.mxu0 0.0
  %12525 = vmatprep.subr.mxu0 0.0
  %12526 = vmatpush1.msra.mxu0 0.0
  %12527 = vmatprep.subr.mxu0 0.0
  %12528 = vmatpush1.msra.mxu0 0.0
  %12529 = vmatprep.subr.mxu0 0.0
  %12530 = vmatpush1.msra.mxu0 0.0
  %12531 = vmatprep.subr.mxu0 0.0
  %12532 = vmatpush1.msra.mxu0 0.0
  %12533 = vmatprep.subr.mxu0 0.0
  %12534 = vmatpush1.msra.mxu0 0.0
  %12535 = vmatprep.subr.mxu0 0.0
  %12536 = vmatpush1.msra.mxu0 0.0
  %12537 = vmatprep.subr.mxu0 0.0
  %12538 = vmatpush1.msra.mxu0 0.0
  %12539 = vmatprep.subr.mxu0 0.0
  %12540 = vmatpush1.msra.mxu0 0.0
  %12541 = vmatprep.subr.mxu0 0.0
  %12542 = vmatpush1.msra.mxu0 0.0
  %12543 = vmatprep.subr.mxu0 0.0
  %12544 = vmatpush1.msra.mxu0 0.0
  %12545 = vmatprep.subr.mxu0 0.0
  %12546 = vmatpush1.msra.mxu0 0.0
  %12547 = vmatprep.subr.mxu0 0.0
  %12548 = vmatpush1.msra.mxu0 0.0
  %12549 = vmatprep.subr.mxu0 0.0
  %12550 = vmatpush1.msra.mxu0 0.0
  %12551 = vmatprep.subr.mxu0 0.0
  %12552 = vmatpush1.msra.mxu0 0.0
  %12553 = vmatprep.subr.mxu0 0.0
  %12554 = vmatpush1.msra.mxu0 0.0
  %12555 = vmatprep.subr.mxu0 0.0
  %12556 = vmatpush1.msra.mxu0 0.0
  %12557 = vmatprep.subr.mxu0 0.0
  %12558 = vmatpush1.msra.mxu0 0.0
  %12559 = vmatprep.subr.mxu0 0.0
  %12560 = vmatpush1.msra.mxu0 0.0
  %12561 = vmatprep.subr.mxu0 0.0
  %12562 = vmatpush1.msra.mxu0 0.0
  %12563 = vmatprep.subr.mxu0 0.0
  %12564 = vmatpush1.msra.mxu0 0.0
  %12565 = vmatprep.mubr.f32.mxu0 0.0
  %12566 = vmatmul.mubr.f32.gmra.mrb[0].mxu0 %v12499
  %v12567 = vpop.f32.mrb[0].mxu0
  %v12568 = vadd.f32 %v12480, %v12567
  %v12569 = vpop.f32.mrb[0].mxu0
  %12570 = vdwg.mxu0
  %v12571 = vld [vmem:[#allocation2 + $0x2] sm:$0x1]
  %v12572 = vld [vmem:[#allocation2 + $0x12] sm:$0x1]
  %v12573 = vld [vmem:[#allocation2 + $0x22] sm:$0x1]
  %v12574 = vld [vmem:[#allocation2 + $0x32] sm:$0x1]
  %v12575 = vld [vmem:[#allocation2 + $0x42] sm:$0x1]
  %v12576 = vld [vmem:[#allocation2 + $0x52] sm:$0x1]
  %s12577 = scalar_lea.vmem %s7, 64
  %v12578 = vld [vmem:[%s12577] sm:$0xff]
  %v12579 = vld [vmem:[%s12577 + $0x8] sm:$0xff]
  %v12580 = vld [vmem:[%s12577 + $0x10] sm:$0xff]
  %v12581 = vld [vmem:[%s12577 + $0x18] sm:$0xff]
  %v12588 = vrot.slane %v12572, 7
  %v12589 = vsel %vm12397, %v12588, %v12571
  %v12590 = vrot.slane %v12573, 6
  %v12591 = vsel %vm12400, %v12590, %v12589
  %v12592 = vrot.slane %v12574, 5
  %v12593 = vsel %vm12403, %v12592, %v12591
  %v12594 = vrot.slane %v12575, 4
  %v12595 = vsel %vm12406, %v12594, %v12593
  %v12596 = vrot.slane %v12576, 3
  %v12597 = vsel %vm12409, %v12596, %v12595
  %v12598 = vsel %vm96, %v12597, 0
  %12600 = vmatprep.subr.mxu0 0.0
  %12601 = vmatpush1.msra.mxu0 %v12578
  %12602 = vmatprep.subr.mxu0 0.0
  %12603 = vmatpush1.msra.mxu0 %v12579
  %12604 = vmatprep.subr.mxu0 0.0
  %12605 = vmatpush1.msra.mxu0 %v12580
  %12606 = vmatprep.subr.mxu0 0.0
  %12607 = vmatpush1.msra.mxu0 %v12581
  %12608 = vmatprep.subr.mxu0 0.0
  %12609 = vmatpush1.msra.mxu0 0.0
  %12610 = vmatprep.subr.mxu0 0.0
  %12611 = vmatpush1.msra.mxu0 0.0
  %12612 = vmatprep.subr.mxu0 0.0
  %12613 = vmatpush1.msra.mxu0 0.0
  %12614 = vmatprep.subr.mxu0 0.0
  %12615 = vmatpush1.msra.mxu0 0.0
  %12616 = vmatprep.subr.mxu0 0.0
  %12617 = vmatpush1.msra.mxu0 0.0
  %12618 = vmatprep.subr.mxu0 0.0
  %12619 = vmatpush1.msra.mxu0 0.0
  %12620 = vmatprep.subr.mxu0 0.0
  %12621 = vmatpush1.msra.mxu0 0.0
  %12622 = vmatprep.subr.mxu0 0.0
  %12623 = vmatpush1.msra.mxu0 0.0
  %12624 = vmatprep.subr.mxu0 0.0
  %12625 = vmatpush1.msra.mxu0 0.0
  %12626 = vmatprep.subr.mxu0 0.0
  %12627 = vmatpush1.msra.mxu0 0.0
  %12628 = vmatprep.subr.mxu0 0.0
  %12629 = vmatpush1.msra.mxu0 0.0
  %12630 = vmatprep.subr.mxu0 0.0
  %12631 = vmatpush1.msra.mxu0 0.0
  %12632 = vmatprep.subr.mxu0 0.0
  %12633 = vmatpush1.msra.mxu0 0.0
  %12634 = vmatprep.subr.mxu0 0.0
  %12635 = vmatpush1.msra.mxu0 0.0
  %12636 = vmatprep.subr.mxu0 0.0
  %12637 = vmatpush1.msra.mxu0 0.0
  %12638 = vmatprep.subr.mxu0 0.0
  %12639 = vmatpush1.msra.mxu0 0.0
  %12640 = vmatprep.subr.mxu0 0.0
  %12641 = vmatpush1.msra.mxu0 0.0
  %12642 = vmatprep.subr.mxu0 0.0
  %12643 = vmatpush1.msra.mxu0 0.0
  %12644 = vmatprep.subr.mxu0 0.0
  %12645 = vmatpush1.msra.mxu0 0.0
  %12646 = vmatprep.subr.mxu0 0.0
  %12647 = vmatpush1.msra.mxu0 0.0
  %12648 = vmatprep.subr.mxu0 0.0
  %12649 = vmatpush1.msra.mxu0 0.0
  %12650 = vmatprep.subr.mxu0 0.0
  %12651 = vmatpush1.msra.mxu0 0.0
  %12652 = vmatprep.subr.mxu0 0.0
  %12653 = vmatpush1.msra.mxu0 0.0
  %12654 = vmatprep.subr.mxu0 0.0
  %12655 = vmatpush1.msra.mxu0 0.0
  %12656 = vmatprep.subr.mxu0 0.0
  %12657 = vmatpush1.msra.mxu0 0.0
  %12658 = vmatprep.subr.mxu0 0.0
  %12659 = vmatpush1.msra.mxu0 0.0
  %12660 = vmatprep.subr.mxu0 0.0
  %12661 = vmatpush1.msra.mxu0 0.0
  %12662 = vmatprep.subr.mxu0 0.0
  %12663 = vmatpush1.msra.mxu0 0.0
  %12664 = vmatprep.mubr.f32.mxu0 0.0
  %12665 = vmatmul.mubr.f32.gmra.mrb[0].mxu0 %v12598
  %v12666 = vpop.f32.mrb[0].mxu0
  %v12667 = vadd.f32 0.0, %v12666
  %v12668 = vpop.f32.mrb[0].mxu0
  %12669 = vdwg.mxu0
  %v12670 = vadd.f32 %v12568, %v12667
  %v12671 = vld [vmem:[#allocation2 + $0x3] sm:$0x1]
  %v12672 = vld [vmem:[#allocation2 + $0x13] sm:$0x1]
  %v12673 = vld [vmem:[#allocation2 + $0x23] sm:$0x1]
  %v12674 = vld [vmem:[#allocation2 + $0x33] sm:$0x1]
  %v12675 = vld [vmem:[#allocation2 + $0x43] sm:$0x1]
  %v12676 = vld [vmem:[#allocation2 + $0x53] sm:$0x1]
  %s12677 = scalar_lea.vmem %s7, 96
  %v12678 = vld [vmem:[%s12677] sm:$0xff]
  %v12679 = vld [vmem:[%s12677 + $0x8] sm:$0xff]
  %v12680 = vld [vmem:[%s12677 + $0x10] sm:$0xff]
  %v12681 = vld [vmem:[%s12677 + $0x18] sm:$0xff]
  %v12688 = vrot.slane %v12672, 7
  %v12689 = vsel %vm12397, %v12688, %v12671
  %v12690 = vrot.slane %v12673, 6
  %v12691 = vsel %vm12400, %v12690, %v12689
  %v12692 = vrot.slane %v12674, 5
  %v12693 = vsel %vm12403, %v12692, %v12691
  %v12694 = vrot.slane %v12675, 4
  %v12695 = vsel %vm12406, %v12694, %v12693
  %v12696 = vrot.slane %v12676, 3
  %v12697 = vsel %vm12409, %v12696, %v12695
  %v12698 = vsel %vm96, %v12697, 0
  %12700 = vmatprep.subr.mxu0 0.0
  %12701 = vmatpush1.msra.mxu0 %v12678
  %12702 = vmatprep.subr.mxu0 0.0
  %12703 = vmatpush1.msra.mxu0 %v12679
  %12704 = vmatprep.subr.mxu0 0.0
  %12705 = vmatpush1.msra.mxu0 %v12680
  %12706 = vmatprep.subr.mxu0 0.0
  %12707 = vmatpush1.msra.mxu0 %v12681
  %12708 = vmatprep.subr.mxu0 0.0
  %12709 = vmatpush1.msra.mxu0 0.0
  %12710 = vmatprep.subr.mxu0 0.0
  %12711 = vmatpush1.msra.mxu0 0.0
  %12712 = vmatprep.subr.mxu0 0.0
  %12713 = vmatpush1.msra.mxu0 0.0
  %12714 = vmatprep.subr.mxu0 0.0
  %12715 = vmatpush1.msra.mxu0 0.0
  %12716 = vmatprep.subr.mxu0 0.0
  %12717 = vmatpush1.msra.mxu0 0.0
  %12718 = vmatprep.subr.mxu0 0.0
  %12719 = vmatpush1.msra.mxu0 0.0
  %12720 = vmatprep.subr.mxu0 0.0
  %12721 = vmatpush1.msra.mxu0 0.0
  %12722 = vmatprep.subr.mxu0 0.0
  %12723 = vmatpush1.msra.mxu0 0.0
  %12724 = vmatprep.subr.mxu0 0.0
  %12725 = vmatpush1.msra.mxu0 0.0
  %12726 = vmatprep.subr.mxu0 0.0
  %12727 = vmatpush1.msra.mxu0 0.0
  %12728 = vmatprep.subr.mxu0 0.0
  %12729 = vmatpush1.msra.mxu0 0.0
  %12730 = vmatprep.subr.mxu0 0.0
  %12731 = vmatpush1.msra.mxu0 0.0
  %12732 = vmatprep.subr.mxu0 0.0
  %12733 = vmatpush1.msra.mxu0 0.0
  %12734 = vmatprep.subr.mxu0 0.0
  %12735 = vmatpush1.msra.mxu0 0.0
  %12736 = vmatprep.subr.mxu0 0.0
  %12737 = vmatpush1.msra.mxu0 0.0
  %12738 = vmatprep.subr.mxu0 0.0
  %12739 = vmatpush1.msra.mxu0 0.0
  %12740 = vmatprep.subr.mxu0 0.0
  %12741 = vmatpush1.msra.mxu0 0.0
  %12742 = vmatprep.subr.mxu0 0.0
  %12743 = vmatpush1.msra.mxu0 0.0
  %12744 = vmatprep.subr.mxu0 0.0
  %12745 = vmatpush1.msra.mxu0 0.0
  %12746 = vmatprep.subr.mxu0 0.0
  %12747 = vmatpush1.msra.mxu0 0.0
  %12748 = vmatprep.subr.mxu0 0.0
  %12749 = vmatpush1.msra.mxu0 0.0
  %12750 = vmatprep.subr.mxu0 0.0
  %12751 = vmatpush1.msra.mxu0 0.0
  %12752 = vmatprep.subr.mxu0 0.0
  %12753 = vmatpush1.msra.mxu0 0.0
  %12754 = vmatprep.subr.mxu0 0.0
  %12755 = vmatpush1.msra.mxu0 0.0
  %12756 = vmatprep.subr.mxu0 0.0
  %12757 = vmatpush1.msra.mxu0 0.0
  %12758 = vmatprep.subr.mxu0 0.0
  %12759 = vmatpush1.msra.mxu0 0.0
  %12760 = vmatprep.subr.mxu0 0.0
  %12761 = vmatpush1.msra.mxu0 0.0
  %12762 = vmatprep.subr.mxu0 0.0
  %12763 = vmatpush1.msra.mxu0 0.0
  %12764 = vmatprep.mubr.f32.mxu0 0.0
  %12765 = vmatmul.mubr.f32.gmra.mrb[0].mxu0 %v12698
  %v12766 = vpop.f32.mrb[0].mxu0
  %v12767 = vadd.f32 0.0, %v12766
  %v12768 = vpop.f32.mrb[0].mxu0
  %12769 = vdwg.mxu0
  %v12770 = vadd.f32 %v12670, %v12767
  %v12771 = vld [vmem:[#allocation2 + $0x4] sm:$0x1]
  %v12772 = vld [vmem:[#allocation2 + $0x14] sm:$0x1]
  %v12773 = vld [vmem:[#allocation2 + $0x24] sm:$0x1]
  %v12774 = vld [vmem:[#allocation2 + $0x34] sm:$0x1]
  %v12775 = vld [vmem:[#allocation2 + $0x44] sm:$0x1]
  %v12776 = vld [vmem:[#allocation2 + $0x54] sm:$0x1]
  %s12777 = scalar_lea.vmem %s7, 128
  %v12778 = vld [vmem:[%s12777] sm:$0xff]
  %v12779 = vld [vmem:[%s12777 + $0x8] sm:$0xff]
  %v12780 = vld [vmem:[%s12777 + $0x10] sm:$0xff]
  %v12781 = vld [vmem:[%s12777 + $0x18] sm:$0xff]
  %v12788 = vrot.slane %v12772, 7
  %v12789 = vsel %vm12397, %v12788, %v12771
  %v12790 = vrot.slane %v12773, 6
  %v12791 = vsel %vm12400, %v12790, %v12789
  %v12792 = vrot.slane %v12774, 5
  %v12793 = vsel %vm12403, %v12792, %v12791
  %v12794 = vrot.slane %v12775, 4
  %v12795 = vsel %vm12406, %v12794, %v12793
  %v12796 = vrot.slane %v12776, 3
  %v12797 = vsel %vm12409, %v12796, %v12795
  %v12798 = vsel %vm96, %v12797, 0
  %12800 = vmatprep.subr.mxu0 0.0
  %12801 = vmatpush1.msra.mxu0 %v12778
  %12802 = vmatprep.subr.mxu0 0.0
  %12803 = vmatpush1.msra.mxu0 %v12779
  %12804 = vmatprep.subr.mxu0 0.0
  %12805 = vmatpush1.msra.mxu0 %v12780
  %12806 = vmatprep.subr.mxu0 0.0
  %12807 = vmatpush1.msra.mxu0 %v12781
  %12808 = vmatprep.subr.mxu0 0.0
  %12809 = vmatpush1.msra.mxu0 0.0
  %12810 = vmatprep.subr.mxu0 0.0
  %12811 = vmatpush1.msra.mxu0 0.0
  %12812 = vmatprep.subr.mxu0 0.0
  %12813 = vmatpush1.msra.mxu0 0.0
  %12814 = vmatprep.subr.mxu0 0.0
  %12815 = vmatpush1.msra.mxu0 0.0
  %12816 = vmatprep.subr.mxu0 0.0
  %12817 = vmatpush1.msra.mxu0 0.0
  %12818 = vmatprep.subr.mxu0 0.0
  %12819 = vmatpush1.msra.mxu0 0.0
  %12820 = vmatprep.subr.mxu0 0.0
  %12821 = vmatpush1.msra.mxu0 0.0
  %12822 = vmatprep.subr.mxu0 0.0
  %12823 = vmatpush1.msra.mxu0 0.0
  %12824 = vmatprep.subr.mxu0 0.0
  %12825 = vmatpush1.msra.mxu0 0.0
  %12826 = vmatprep.subr.mxu0 0.0
  %12827 = vmatpush1.msra.mxu0 0.0
  %12828 = vmatprep.subr.mxu0 0.0
  %12829 = vmatpush1.msra.mxu0 0.0
  %12830 = vmatprep.subr.mxu0 0.0
  %12831 = vmatpush1.msra.mxu0 0.0
  %12832 = vmatprep.subr.mxu0 0.0
  %12833 = vmatpush1.msra.mxu0 0.0
  %12834 = vmatprep.subr.mxu0 0.0
  %12835 = vmatpush1.msra.mxu0 0.0
  %12836 = vmatprep.subr.mxu0 0.0
  %12837 = vmatpush1.msra.mxu0 0.0
  %12838 = vmatprep.subr.mxu0 0.0
  %12839 = vmatpush1.msra.mxu0 0.0
  %12840 = vmatprep.subr.mxu0 0.0
  %12841 = vmatpush1.msra.mxu0 0.0
  %12842 = vmatprep.subr.mxu0 0.0
  %12843 = vmatpush1.msra.mxu0 0.0
  %12844 = vmatprep.subr.mxu0 0.0
  %12845 = vmatpush1.msra.mxu0 0.0
  %12846 = vmatprep.subr.mxu0 0.0
  %12847 = vmatpush1.msra.mxu0 0.0
  %12848 = vmatprep.subr.mxu0 0.0
  %12849 = vmatpush1.msra.mxu0 0.0
  %12850 = vmatprep.subr.mxu0 0.0
  %12851 = vmatpush1.msra.mxu0 0.0
  %12852 = vmatprep.subr.mxu0 0.0
  %12853 = vmatpush1.msra.mxu0 0.0
  %12854 = vmatprep.subr.mxu0 0.0
  %12855 = vmatpush1.msra.mxu0 0.0
  %12856 = vmatprep.subr.mxu0 0.0
  %12857 = vmatpush1.msra.mxu0 0.0
  %12858 = vmatprep.subr.mxu0 0.0
  %12859 = vmatpush1.msra.mxu0 0.0
  %12860 = vmatprep.subr.mxu0 0.0
  %12861 = vmatpush1.msra.mxu0 0.0
  %12862 = vmatprep.subr.mxu0 0.0
  %12863 = vmatpush1.msra.mxu0 0.0
  %12864 = vmatprep.mubr.f32.mxu0 0.0
  %12865 = vmatmul.mubr.f32.gmra.mrb[0].mxu0 %v12798
  %v12866 = vpop.f32.mrb[0].mxu0
  %v12867 = vadd.f32 0.0, %v12866
  %v12868 = vpop.f32.mrb[0].mxu0
  %12869 = vdwg.mxu0
  %v12870 = vadd.f32 %v12770, %v12867
  %v12871 = vld [vmem:[#allocation2 + $0x5] sm:$0x1]
  %v12872 = vld [vmem:[#allocation2 + $0x15] sm:$0x1]
  %v12873 = vld [vmem:[#allocation2 + $0x25] sm:$0x1]
  %v12874 = vld [vmem:[#allocation2 + $0x35] sm:$0x1]
  %v12875 = vld [vmem:[#allocation2 + $0x45] sm:$0x1]
  %v12876 = vld [vmem:[#allocation2 + $0x55] sm:$0x1]
  %s12877 = scalar_lea.vmem %s7, 160
  %v12878 = vld [vmem:[%s12877] sm:$0xff]
  %v12879 = vld [vmem:[%s12877 + $0x8] sm:$0xff]
  %v12880 = vld [vmem:[%s12877 + $0x10] sm:$0xff]
  %v12881 = vld [vmem:[%s12877 + $0x18] sm:$0xff]
  %v12888 = vrot.slane %v12872, 7
  %v12889 = vsel %vm12397, %v12888, %v12871
  %v12890 = vrot.slane %v12873, 6
  %v12891 = vsel %vm12400, %v12890, %v12889
  %v12892 = vrot.slane %v12874, 5
  %v12893 = vsel %vm12403, %v12892, %v12891
  %v12894 = vrot.slane %v12875, 4
  %v12895 = vsel %vm12406, %v12894, %v12893
  %v12896 = vrot.slane %v12876, 3
  %v12897 = vsel %vm12409, %v12896, %v12895
  %v12898 = vsel %vm96, %v12897, 0
  %12900 = vmatprep.subr.mxu0 0.0
  %12901 = vmatpush1.msra.mxu0 %v12878
  %12902 = vmatprep.subr.mxu0 0.0
  %12903 = vmatpush1.msra.mxu0 %v12879
  %12904 = vmatprep.subr.mxu0 0.0
  %12905 = vmatpush1.msra.mxu0 %v12880
  %12906 = vmatprep.subr.mxu0 0.0
  %12907 = vmatpush1.msra.mxu0 %v12881
  %12908 = vmatprep.subr.mxu0 0.0
  %12909 = vmatpush1.msra.mxu0 0.0
  %12910 = vmatprep.subr.mxu0 0.0
  %12911 = vmatpush1.msra.mxu0 0.0
  %12912 = vmatprep.subr.mxu0 0.0
  %12913 = vmatpush1.msra.mxu0 0.0
  %12914 = vmatprep.subr.mxu0 0.0
  %12915 = vmatpush1.msra.mxu0 0.0
  %12916 = vmatprep.subr.mxu0 0.0
  %12917 = vmatpush1.msra.mxu0 0.0
  %12918 = vmatprep.subr.mxu0 0.0
  %12919 = vmatpush1.msra.mxu0 0.0
  %12920 = vmatprep.subr.mxu0 0.0
  %12921 = vmatpush1.msra.mxu0 0.0
  %12922 = vmatprep.subr.mxu0 0.0
  %12923 = vmatpush1.msra.mxu0 0.0
  %12924 = vmatprep.subr.mxu0 0.0
  %12925 = vmatpush1.msra.mxu0 0.0
  %12926 = vmatprep.subr.mxu0 0.0
  %12927 = vmatpush1.msra.mxu0 0.0
  %12928 = vmatprep.subr.mxu0 0.0
  %12929 = vmatpush1.msra.mxu0 0.0
  %12930 = vmatprep.subr.mxu0 0.0
  %12931 = vmatpush1.msra.mxu0 0.0
  %12932 = vmatprep.subr.mxu0 0.0
  %12933 = vmatpush1.msra.mxu0 0.0
  %12934 = vmatprep.subr.mxu0 0.0
  %12935 = vmatpush1.msra.mxu0 0.0
  %12936 = vmatprep.subr.mxu0 0.0
  %12937 = vmatpush1.msra.mxu0 0.0
  %12938 = vmatprep.subr.mxu0 0.0
  %12939 = vmatpush1.msra.mxu0 0.0
  %12940 = vmatprep.subr.mxu0 0.0
  %12941 = vmatpush1.msra.mxu0 0.0
  %12942 = vmatprep.subr.mxu0 0.0
  %12943 = vmatpush1.msra.mxu0 0.0
  %12944 = vmatprep.subr.mxu0 0.0
  %12945 = vmatpush1.msra.mxu0 0.0
  %12946 = vmatprep.subr.mxu0 0.0
  %12947 = vmatpush1.msra.mxu0 0.0
  %12948 = vmatprep.subr.mxu0 0.0
  %12949 = vmatpush1.msra.mxu0 0.0
  %12950 = vmatprep.subr.mxu0 0.0
  %12951 = vmatpush1.msra.mxu0 0.0
  %12952 = vmatprep.subr.mxu0 0.0
  %12953 = vmatpush1.msra.mxu0 0.0
  %12954 = vmatprep.subr.mxu0 0.0
  %12955 = vmatpush1.msra.mxu0 0.0
  %12956 = vmatprep.subr.mxu0 0.0
  %12957 = vmatpush1.msra.mxu0 0.0
  %12958 = vmatprep.subr.mxu0 0.0
  %12959 = vmatpush1.msra.mxu0 0.0
  %12960 = vmatprep.subr.mxu0 0.0
  %12961 = vmatpush1.msra.mxu0 0.0
  %12962 = vmatprep.subr.mxu0 0.0
  %12963 = vmatpush1.msra.mxu0 0.0
  %12964 = vmatprep.mubr.f32.mxu0 0.0
  %12965 = vmatmul.mubr.f32.gmra.mrb[0].mxu0 %v12898
  %v12966 = vpop.f32.mrb[0].mxu0
  %v12967 = vadd.f32 0.0, %v12966
  %v12968 = vpop.f32.mrb[0].mxu0
  %12969 = vdwg.mxu0
  %v12970 = vadd.f32 %v12870, %v12967
  %v12971 = vld [vmem:[#allocation2 + $0x6] sm:$0x1]
  %v12972 = vld [vmem:[#allocation2 + $0x16] sm:$0x1]
  %v12973 = vld [vmem:[#allocation2 + $0x26] sm:$0x1]
  %v12974 = vld [vmem:[#allocation2 + $0x36] sm:$0x1]
  %v12975 = vld [vmem:[#allocation2 + $0x46] sm:$0x1]
  %v12976 = vld [vmem:[#allocation2 + $0x56] sm:$0x1]
  %s12977 = scalar_lea.vmem %s7, 192
  %v12978 = vld [vmem:[%s12977] sm:$0xff]
  %v12979 = vld [vmem:[%s12977 + $0x8] sm:$0xff]
  %v12980 = vld [vmem:[%s12977 + $0x10] sm:$0xff]
  %v12981 = vld [vmem:[%s12977 + $0x18] sm:$0xff]
  %v12988 = vrot.slane %v12972, 7
  %v12989 = vsel %vm12397, %v12988, %v12971
  %v12990 = vrot.slane %v12973, 6
  %v12991 = vsel %vm12400, %v12990, %v12989
  %v12992 = vrot.slane %v12974, 5
  %v12993 = vsel %vm12403, %v12992, %v12991
  %v12994 = vrot.slane %v12975, 4
  %v12995 = vsel %vm12406, %v12994, %v12993
  %v12996 = vrot.slane %v12976, 3
  %v12997 = vsel %vm12409, %v12996, %v12995
  %v12998 = vsel %vm96, %v12997, 0
  %13000 = vmatprep.subr.mxu0 0.0
  %13001 = vmatpush1.msra.mxu0 %v12978
  %13002 = vmatprep.subr.mxu0 0.0
  %13003 = vmatpush1.msra.mxu0 %v12979
  %13004 = vmatprep.subr.mxu0 0.0
  %13005 = vmatpush1.msra.mxu0 %v12980
  %13006 = vmatprep.subr.mxu0 0.0
  %13007 = vmatpush1.msra.mxu0 %v12981
  %13008 = vmatprep.subr.mxu0 0.0
  %13009 = vmatpush1.msra.mxu0 0.0
  %13010 = vmatprep.subr.mxu0 0.0
  %13011 = vmatpush1.msra.mxu0 0.0
  %13012 = vmatprep.subr.mxu0 0.0
  %13013 = vmatpush1.msra.mxu0 0.0
  %13014 = vmatprep.subr.mxu0 0.0
  %13015 = vmatpush1.msra.mxu0 0.0
  %13016 = vmatprep.subr.mxu0 0.0
  %13017 = vmatpush1.msra.mxu0 0.0
  %13018 = vmatprep.subr.mxu0 0.0
  %13019 = vmatpush1.msra.mxu0 0.0
  %13020 = vmatprep.subr.mxu0 0.0
  %13021 = vmatpush1.msra.mxu0 0.0
  %13022 = vmatprep.subr.mxu0 0.0
  %13023 = vmatpush1.msra.mxu0 0.0
  %13024 = vmatprep.subr.mxu0 0.0
  %13025 = vmatpush1.msra.mxu0 0.0
  %13026 = vmatprep.subr.mxu0 0.0
  %13027 = vmatpush1.msra.mxu0 0.0
  %13028 = vmatprep.subr.mxu0 0.0
  %13029 = vmatpush1.msra.mxu0 0.0
  %13030 = vmatprep.subr.mxu0 0.0
  %13031 = vmatpush1.msra.mxu0 0.0
  %13032 = vmatprep.subr.mxu0 0.0
  %13033 = vmatpush1.msra.mxu0 0.0
  %13034 = vmatprep.subr.mxu0 0.0
  %13035 = vmatpush1.msra.mxu0 0.0
  %13036 = vmatprep.subr.mxu0 0.0
  %13037 = vmatpush1.msra.mxu0 0.0
  %13038 = vmatprep.subr.mxu0 0.0
  %13039 = vmatpush1.msra.mxu0 0.0
  %13040 = vmatprep.subr.mxu0 0.0
  %13041 = vmatpush1.msra.mxu0 0.0
  %13042 = vmatprep.subr.mxu0 0.0
  %13043 = vmatpush1.msra.mxu0 0.0
  %13044 = vmatprep.subr.mxu0 0.0
  %13045 = vmatpush1.msra.mxu0 0.0
  %13046 = vmatprep.subr.mxu0 0.0
  %13047 = vmatpush1.msra.mxu0 0.0
  %13048 = vmatprep.subr.mxu0 0.0
  %13049 = vmatpush1.msra.mxu0 0.0
  %13050 = vmatprep.subr.mxu0 0.0
  %13051 = vmatpush1.msra.mxu0 0.0
  %13052 = vmatprep.subr.mxu0 0.0
  %13053 = vmatpush1.msra.mxu0 0.0
  %13054 = vmatprep.subr.mxu0 0.0
  %13055 = vmatpush1.msra.mxu0 0.0
  %13056 = vmatprep.subr.mxu0 0.0
  %13057 = vmatpush1.msra.mxu0 0.0
  %13058 = vmatprep.subr.mxu0 0.0
  %13059 = vmatpush1.msra.mxu0 0.0
  %13060 = vmatprep.subr.mxu0 0.0
  %13061 = vmatpush1.msra.mxu0 0.0
  %13062 = vmatprep.subr.mxu0 0.0
  %13063 = vmatpush1.msra.mxu0 0.0
  %13064 = vmatprep.mubr.f32.mxu0 0.0
  %13065 = vmatmul.mubr.f32.gmra.mrb[0].mxu0 %v12998
  %v13066 = vpop.f32.mrb[0].mxu0
  %v13067 = vadd.f32 0.0, %v13066
  %v13068 = vpop.f32.mrb[0].mxu0
  %13069 = vdwg.mxu0
  %v13070 = vadd.f32 %v12970, %v13067
  %v13071 = vld [vmem:[#allocation2 + $0x7] sm:$0x1]
  %v13072 = vld [vmem:[#allocation2 + $0x17] sm:$0x1]
  %v13073 = vld [vmem:[#allocation2 + $0x27] sm:$0x1]
  %v13074 = vld [vmem:[#allocation2 + $0x37] sm:$0x1]
  %v13075 = vld [vmem:[#allocation2 + $0x47] sm:$0x1]
  %v13076 = vld [vmem:[#allocation2 + $0x57] sm:$0x1]
  %s13077 = scalar_lea.vmem %s7, 224
  %v13078 = vld [vmem:[%s13077] sm:$0xff]
  %v13079 = vld [vmem:[%s13077 + $0x8] sm:$0xff]
  %v13080 = vld [vmem:[%s13077 + $0x10] sm:$0xff]
  %v13081 = vld [vmem:[%s13077 + $0x18] sm:$0xff]
  %v13088 = vrot.slane %v13072, 7
  %v13089 = vsel %vm12397, %v13088, %v13071
  %v13090 = vrot.slane %v13073, 6
  %v13091 = vsel %vm12400, %v13090, %v13089
  %v13092 = vrot.slane %v13074, 5
  %v13093 = vsel %vm12403, %v13092, %v13091
  %v13094 = vrot.slane %v13075, 4
  %v13095 = vsel %vm12406, %v13094, %v13093
  %v13096 = vrot.slane %v13076, 3
  %v13097 = vsel %vm12409, %v13096, %v13095
  %v13098 = vsel %vm96, %v13097, 0
  %13100 = vmatprep.subr.mxu0 0.0
  %13101 = vmatpush1.msra.mxu0 %v13078
  %13102 = vmatprep.subr.mxu0 0.0
  %13103 = vmatpush1.msra.mxu0 %v13079
  %13104 = vmatprep.subr.mxu0 0.0
  %13105 = vmatpush1.msra.mxu0 %v13080
  %13106 = vmatprep.subr.mxu0 0.0
  %13107 = vmatpush1.msra.mxu0 %v13081
  %13108 = vmatprep.subr.mxu0 0.0
  %13109 = vmatpush1.msra.mxu0 0.0
  %13110 = vmatprep.subr.mxu0 0.0
  %13111 = vmatpush1.msra.mxu0 0.0
  %13112 = vmatprep.subr.mxu0 0.0
  %13113 = vmatpush1.msra.mxu0 0.0
  %13114 = vmatprep.subr.mxu0 0.0
  %13115 = vmatpush1.msra.mxu0 0.0
  %13116 = vmatprep.subr.mxu0 0.0
  %13117 = vmatpush1.msra.mxu0 0.0
  %13118 = vmatprep.subr.mxu0 0.0
  %13119 = vmatpush1.msra.mxu0 0.0
  %13120 = vmatprep.subr.mxu0 0.0
  %13121 = vmatpush1.msra.mxu0 0.0
  %13122 = vmatprep.subr.mxu0 0.0
  %13123 = vmatpush1.msra.mxu0 0.0
  %13124 = vmatprep.subr.mxu0 0.0
  %13125 = vmatpush1.msra.mxu0 0.0
  %13126 = vmatprep.subr.mxu0 0.0
  %13127 = vmatpush1.msra.mxu0 0.0
  %13128 = vmatprep.subr.mxu0 0.0
  %13129 = vmatpush1.msra.mxu0 0.0
  %13130 = vmatprep.subr.mxu0 0.0
  %13131 = vmatpush1.msra.mxu0 0.0
  %13132 = vmatprep.subr.mxu0 0.0
  %13133 = vmatpush1.msra.mxu0 0.0
  %13134 = vmatprep.subr.mxu0 0.0
  %13135 = vmatpush1.msra.mxu0 0.0
  %13136 = vmatprep.subr.mxu0 0.0
  %13137 = vmatpush1.msra.mxu0 0.0
  %13138 = vmatprep.subr.mxu0 0.0
  %13139 = vmatpush1.msra.mxu0 0.0
  %13140 = vmatprep.subr.mxu0 0.0
  %13141 = vmatpush1.msra.mxu0 0.0
  %13142 = vmatprep.subr.mxu0 0.0
  %13143 = vmatpush1.msra.mxu0 0.0
  %13144 = vmatprep.subr.mxu0 0.0
  %13145 = vmatpush1.msra.mxu0 0.0
  %13146 = vmatprep.subr.mxu0 0.0
  %13147 = vmatpush1.msra.mxu0 0.0
  %13148 = vmatprep.subr.mxu0 0.0
  %13149 = vmatpush1.msra.mxu0 0.0
  %13150 = vmatprep.subr.mxu0 0.0
  %13151 = vmatpush1.msra.mxu0 0.0
  %13152 = vmatprep.subr.mxu0 0.0
  %13153 = vmatpush1.msra.mxu0 0.0
  %13154 = vmatprep.subr.mxu0 0.0
  %13155 = vmatpush1.msra.mxu0 0.0
  %13156 = vmatprep.subr.mxu0 0.0
  %13157 = vmatpush1.msra.mxu0 0.0
  %13158 = vmatprep.subr.mxu0 0.0
  %13159 = vmatpush1.msra.mxu0 0.0
  %13160 = vmatprep.subr.mxu0 0.0
  %13161 = vmatpush1.msra.mxu0 0.0
  %13162 = vmatprep.subr.mxu0 0.0
  %13163 = vmatpush1.msra.mxu0 0.0
  %13164 = vmatprep.mubr.f32.mxu0 0.0
  %13165 = vmatmul.mubr.f32.gmra.mrb[0].mxu0 %v13098
  %v13166 = vpop.f32.mrb[0].mxu0
  %v13167 = vadd.f32 0.0, %v13166
  %v13168 = vpop.f32.mrb[0].mxu0
  %13169 = vdwg.mxu0
  %v13170 = vadd.f32 %v13070, %v13167
  %v13171 = vld [vmem:[#allocation2 + $0x8] sm:$0x1]
  %v13172 = vld [vmem:[#allocation2 + $0x18] sm:$0x1]
  %v13173 = vld [vmem:[#allocation2 + $0x28] sm:$0x1]
  %v13174 = vld [vmem:[#allocation2 + $0x38] sm:$0x1]
  %v13175 = vld [vmem:[#allocation2 + $0x48] sm:$0x1]
  %v13176 = vld [vmem:[#allocation2 + $0x58] sm:$0x1]
  %s13177 = scalar_lea.vmem %s7, 256
  %v13178 = vld [vmem:[%s13177] sm:$0xff]
  %v13179 = vld [vmem:[%s13177 + $0x8] sm:$0xff]
  %v13180 = vld [vmem:[%s13177 + $0x10] sm:$0xff]
  %v13181 = vld [vmem:[%s13177 + $0x18] sm:$0xff]
  %v13188 = vrot.slane %v13172, 7
  %v13189 = vsel %vm12397, %v13188, %v13171
  %v13190 = vrot.slane %v13173, 6
  %v13191 = vsel %vm12400, %v13190, %v13189
  %v13192 = vrot.slane %v13174, 5
  %v13193 = vsel %vm12403, %v13192, %v13191
  %v13194 = vrot.slane %v13175, 4
  %v13195 = vsel %vm12406, %v13194, %v13193
  %v13196 = vrot.slane %v13176, 3
  %v13197 = vsel %vm12409, %v13196, %v13195
  %v13198 = vsel %vm96, %v13197, 0
  %13200 = vmatprep.subr.mxu0 0.0
  %13201 = vmatpush1.msra.mxu0 %v13178
  %13202 = vmatprep.subr.mxu0 0.0
  %13203 = vmatpush1.msra.mxu0 %v13179
  %13204 = vmatprep.subr.mxu0 0.0
  %13205 = vmatpush1.msra.mxu0 %v13180
  %13206 = vmatprep.subr.mxu0 0.0
  %13207 = vmatpush1.msra.mxu0 %v13181
  %13208 = vmatprep.subr.mxu0 0.0
  %13209 = vmatpush1.msra.mxu0 0.0
  %13210 = vmatprep.subr.mxu0 0.0
  %13211 = vmatpush1.msra.mxu0 0.0
  %13212 = vmatprep.subr.mxu0 0.0
  %13213 = vmatpush1.msra.mxu0 0.0
  %13214 = vmatprep.subr.mxu0 0.0
  %13215 = vmatpush1.msra.mxu0 0.0
  %13216 = vmatprep.subr.mxu0 0.0
  %13217 = vmatpush1.msra.mxu0 0.0
  %13218 = vmatprep.subr.mxu0 0.0
  %13219 = vmatpush1.msra.mxu0 0.0
  %13220 = vmatprep.subr.mxu0 0.0
  %13221 = vmatpush1.msra.mxu0 0.0
  %13222 = vmatprep.subr.mxu0 0.0
  %13223 = vmatpush1.msra.mxu0 0.0
  %13224 = vmatprep.subr.mxu0 0.0
  %13225 = vmatpush1.msra.mxu0 0.0
  %13226 = vmatprep.subr.mxu0 0.0
  %13227 = vmatpush1.msra.mxu0 0.0
  %13228 = vmatprep.subr.mxu0 0.0
  %13229 = vmatpush1.msra.mxu0 0.0
  %13230 = vmatprep.subr.mxu0 0.0
  %13231 = vmatpush1.msra.mxu0 0.0
  %13232 = vmatprep.subr.mxu0 0.0
  %13233 = vmatpush1.msra.mxu0 0.0
  %13234 = vmatprep.subr.mxu0 0.0
  %13235 = vmatpush1.msra.mxu0 0.0
  %13236 = vmatprep.subr.mxu0 0.0
  %13237 = vmatpush1.msra.mxu0 0.0
  %13238 = vmatprep.subr.mxu0 0.0
  %13239 = vmatpush1.msra.mxu0 0.0
  %13240 = vmatprep.subr.mxu0 0.0
  %13241 = vmatpush1.msra.mxu0 0.0
  %13242 = vmatprep.subr.mxu0 0.0
  %13243 = vmatpush1.msra.mxu0 0.0
  %13244 = vmatprep.subr.mxu0 0.0
  %13245 = vmatpush1.msra.mxu0 0.0
  %13246 = vmatprep.subr.mxu0 0.0
  %13247 = vmatpush1.msra.mxu0 0.0
  %13248 = vmatprep.subr.mxu0 0.0
  %13249 = vmatpush1.msra.mxu0 0.0
  %13250 = vmatprep.subr.mxu0 0.0
  %13251 = vmatpush1.msra.mxu0 0.0
  %13252 = vmatprep.subr.mxu0 0.0
  %13253 = vmatpush1.msra.mxu0 0.0
  %13254 = vmatprep.subr.mxu0 0.0
  %13255 = vmatpush1.msra.mxu0 0.0
  %13256 = vmatprep.subr.mxu0 0.0
  %13257 = vmatpush1.msra.mxu0 0.0
  %13258 = vmatprep.subr.mxu0 0.0
  %13259 = vmatpush1.msra.mxu0 0.0
  %13260 = vmatprep.subr.mxu0 0.0
  %13261 = vmatpush1.msra.mxu0 0.0
  %13262 = vmatprep.subr.mxu0 0.0
  %13263 = vmatpush1.msra.mxu0 0.0
  %13264 = vmatprep.mubr.f32.mxu0 0.0
  %13265 = vmatmul.mubr.f32.gmra.mrb[0].mxu0 %v13198
  %v13266 = vpop.f32.mrb[0].mxu0
  %v13267 = vadd.f32 0.0, %v13266
  %v13268 = vpop.f32.mrb[0].mxu0
  %13269 = vdwg.mxu0
  %v13270 = vadd.f32 %v13170, %v13267
  %v13271 = vld [vmem:[#allocation2 + $0x9] sm:$0x1]
  %v13272 = vld [vmem:[#allocation2 + $0x19] sm:$0x1]
  %v13273 = vld [vmem:[#allocation2 + $0x29] sm:$0x1]
  %v13274 = vld [vmem:[#allocation2 + $0x39] sm:$0x1]
  %v13275 = vld [vmem:[#allocation2 + $0x49] sm:$0x1]
  %v13276 = vld [vmem:[#allocation2 + $0x59] sm:$0x1]
  %s13277 = scalar_lea.vmem %s7, 288
  %v13278 = vld [vmem:[%s13277] sm:$0xff]
  %v13279 = vld [vmem:[%s13277 + $0x8] sm:$0xff]
  %v13280 = vld [vmem:[%s13277 + $0x10] sm:$0xff]
  %v13281 = vld [vmem:[%s13277 + $0x18] sm:$0xff]
  %v13288 = vrot.slane %v13272, 7
  %v13289 = vsel %vm12397, %v13288, %v13271
  %v13290 = vrot.slane %v13273, 6
  %v13291 = vsel %vm12400, %v13290, %v13289
  %v13292 = vrot.slane %v13274, 5
  %v13293 = vsel %vm12403, %v13292, %v13291
  %v13294 = vrot.slane %v13275, 4
  %v13295 = vsel %vm12406, %v13294, %v13293
  %v13296 = vrot.slane %v13276, 3
  %v13297 = vsel %vm12409, %v13296, %v13295
  %v13298 = vsel %vm96, %v13297, 0
  %13300 = vmatprep.subr.mxu0 0.0
  %13301 = vmatpush1.msra.mxu0 %v13278
  %13302 = vmatprep.subr.mxu0 0.0
  %13303 = vmatpush1.msra.mxu0 %v13279
  %13304 = vmatprep.subr.mxu0 0.0
  %13305 = vmatpush1.msra.mxu0 %v13280
  %13306 = vmatprep.subr.mxu0 0.0
  %13307 = vmatpush1.msra.mxu0 %v13281
  %13308 = vmatprep.subr.mxu0 0.0
  %13309 = vmatpush1.msra.mxu0 0.0
  %13310 = vmatprep.subr.mxu0 0.0
  %13311 = vmatpush1.msra.mxu0 0.0
  %13312 = vmatprep.subr.mxu0 0.0
  %13313 = vmatpush1.msra.mxu0 0.0
  %13314 = vmatprep.subr.mxu0 0.0
  %13315 = vmatpush1.msra.mxu0 0.0
  %13316 = vmatprep.subr.mxu0 0.0
  %13317 = vmatpush1.msra.mxu0 0.0
  %13318 = vmatprep.subr.mxu0 0.0
  %13319 = vmatpush1.msra.mxu0 0.0
  %13320 = vmatprep.subr.mxu0 0.0
  %13321 = vmatpush1.msra.mxu0 0.0
  %13322 = vmatprep.subr.mxu0 0.0
  %13323 = vmatpush1.msra.mxu0 0.0
  %13324 = vmatprep.subr.mxu0 0.0
  %13325 = vmatpush1.msra.mxu0 0.0
  %13326 = vmatprep.subr.mxu0 0.0
  %13327 = vmatpush1.msra.mxu0 0.0
  %13328 = vmatprep.subr.mxu0 0.0
  %13329 = vmatpush1.msra.mxu0 0.0
  %13330 = vmatprep.subr.mxu0 0.0
  %13331 = vmatpush1.msra.mxu0 0.0
  %13332 = vmatprep.subr.mxu0 0.0
  %13333 = vmatpush1.msra.mxu0 0.0
  %13334 = vmatprep.subr.mxu0 0.0
  %13335 = vmatpush1.msra.mxu0 0.0
  %13336 = vmatprep.subr.mxu0 0.0
  %13337 = vmatpush1.msra.mxu0 0.0
  %13338 = vmatprep.subr.mxu0 0.0
  %13339 = vmatpush1.msra.mxu0 0.0
  %13340 = vmatprep.subr.mxu0 0.0
  %13341 = vmatpush1.msra.mxu0 0.0
  %13342 = vmatprep.subr.mxu0 0.0
  %13343 = vmatpush1.msra.mxu0 0.0
  %13344 = vmatprep.subr.mxu0 0.0
  %13345 = vmatpush1.msra.mxu0 0.0
  %13346 = vmatprep.subr.mxu0 0.0
  %13347 = vmatpush1.msra.mxu0 0.0
  %13348 = vmatprep.subr.mxu0 0.0
  %13349 = vmatpush1.msra.mxu0 0.0
  %13350 = vmatprep.subr.mxu0 0.0
  %13351 = vmatpush1.msra.mxu0 0.0
  %13352 = vmatprep.subr.mxu0 0.0
  %13353 = vmatpush1.msra.mxu0 0.0
  %13354 = vmatprep.subr.mxu0 0.0
  %13355 = vmatpush1.msra.mxu0 0.0
  %13356 = vmatprep.subr.mxu0 0.0
  %13357 = vmatpush1.msra.mxu0 0.0
  %13358 = vmatprep.subr.mxu0 0.0
  %13359 = vmatpush1.msra.mxu0 0.0
  %13360 = vmatprep.subr.mxu0 0.0
  %13361 = vmatpush1.msra.mxu0 0.0
  %13362 = vmatprep.subr.mxu0 0.0
  %13363 = vmatpush1.msra.mxu0 0.0
  %13364 = vmatprep.mubr.f32.mxu0 0.0
  %13365 = vmatmul.mubr.f32.gmra.mrb[0].mxu0 %v13298
  %v13366 = vpop.f32.mrb[0].mxu0
  %v13367 = vadd.f32 0.0, %v13366
  %v13368 = vpop.f32.mrb[0].mxu0
  %13369 = vdwg.mxu0
  %v13370 = vadd.f32 %v13270, %v13367
  %v13371 = vld [vmem:[#allocation2 + $0xa] sm:$0x1]
  %v13372 = vld [vmem:[#allocation2 + $0x1a] sm:$0x1]
  %v13373 = vld [vmem:[#allocation2 + $0x2a] sm:$0x1]
  %v13374 = vld [vmem:[#allocation2 + $0x3a] sm:$0x1]
  %v13375 = vld [vmem:[#allocation2 + $0x4a] sm:$0x1]
  %v13376 = vld [vmem:[#allocation2 + $0x5a] sm:$0x1]
  %s13377 = scalar_lea.vmem %s7, 320
  %v13378 = vld [vmem:[%s13377] sm:$0xff]
  %v13379 = vld [vmem:[%s13377 + $0x8] sm:$0xff]
  %v13380 = vld [vmem:[%s13377 + $0x10] sm:$0xff]
  %v13381 = vld [vmem:[%s13377 + $0x18] sm:$0xff]
  %v13388 = vrot.slane %v13372, 7
  %v13389 = vsel %vm12397, %v13388, %v13371
  %v13390 = vrot.slane %v13373, 6
  %v13391 = vsel %vm12400, %v13390, %v13389
  %v13392 = vrot.slane %v13374, 5
  %v13393 = vsel %vm12403, %v13392, %v13391
  %v13394 = vrot.slane %v13375, 4
  %v13395 = vsel %vm12406, %v13394, %v13393
  %v13396 = vrot.slane %v13376, 3
  %v13397 = vsel %vm12409, %v13396, %v13395
  %v13398 = vsel %vm96, %v13397, 0
  %13400 = vmatprep.subr.mxu0 0.0
  %13401 = vmatpush1.msra.mxu0 %v13378
  %13402 = vmatprep.subr.mxu0 0.0
  %13403 = vmatpush1.msra.mxu0 %v13379
  %13404 = vmatprep.subr.mxu0 0.0
  %13405 = vmatpush1.msra.mxu0 %v13380
  %13406 = vmatprep.subr.mxu0 0.0
  %13407 = vmatpush1.msra.mxu0 %v13381
  %13408 = vmatprep.subr.mxu0 0.0
  %13409 = vmatpush1.msra.mxu0 0.0
  %13410 = vmatprep.subr.mxu0 0.0
  %13411 = vmatpush1.msra.mxu0 0.0
  %13412 = vmatprep.subr.mxu0 0.0
  %13413 = vmatpush1.msra.mxu0 0.0
  %13414 = vmatprep.subr.mxu0 0.0
  %13415 = vmatpush1.msra.mxu0 0.0
  %13416 = vmatprep.subr.mxu0 0.0
  %13417 = vmatpush1.msra.mxu0 0.0
  %13418 = vmatprep.subr.mxu0 0.0
  %13419 = vmatpush1.msra.mxu0 0.0
  %13420 = vmatprep.subr.mxu0 0.0
  %13421 = vmatpush1.msra.mxu0 0.0
  %13422 = vmatprep.subr.mxu0 0.0
  %13423 = vmatpush1.msra.mxu0 0.0
  %13424 = vmatprep.subr.mxu0 0.0
  %13425 = vmatpush1.msra.mxu0 0.0
  %13426 = vmatprep.subr.mxu0 0.0
  %13427 = vmatpush1.msra.mxu0 0.0
  %13428 = vmatprep.subr.mxu0 0.0
  %13429 = vmatpush1.msra.mxu0 0.0
  %13430 = vmatprep.subr.mxu0 0.0
  %13431 = vmatpush1.msra.mxu0 0.0
  %13432 = vmatprep.subr.mxu0 0.0
  %13433 = vmatpush1.msra.mxu0 0.0
  %13434 = vmatprep.subr.mxu0 0.0
  %13435 = vmatpush1.msra.mxu0 0.0
  %13436 = vmatprep.subr.mxu0 0.0
  %13437 = vmatpush1.msra.mxu0 0.0
  %13438 = vmatprep.subr.mxu0 0.0
  %13439 = vmatpush1.msra.mxu0 0.0
  %13440 = vmatprep.subr.mxu0 0.0
  %13441 = vmatpush1.msra.mxu0 0.0
  %13442 = vmatprep.subr.mxu0 0.0
  %13443 = vmatpush1.msra.mxu0 0.0
  %13444 = vmatprep.subr.mxu0 0.0
  %13445 = vmatpush1.msra.mxu0 0.0
  %13446 = vmatprep.subr.mxu0 0.0
  %13447 = vmatpush1.msra.mxu0 0.0
  %13448 = vmatprep.subr.mxu0 0.0
  %13449 = vmatpush1.msra.mxu0 0.0
  %13450 = vmatprep.subr.mxu0 0.0
  %13451 = vmatpush1.msra.mxu0 0.0
  %13452 = vmatprep.subr.mxu0 0.0
  %13453 = vmatpush1.msra.mxu0 0.0
  %13454 = vmatprep.subr.mxu0 0.0
  %13455 = vmatpush1.msra.mxu0 0.0
  %13456 = vmatprep.subr.mxu0 0.0
  %13457 = vmatpush1.msra.mxu0 0.0
  %13458 = vmatprep.subr.mxu0 0.0
  %13459 = vmatpush1.msra.mxu0 0.0
  %13460 = vmatprep.subr.mxu0 0.0
  %13461 = vmatpush1.msra.mxu0 0.0
  %13462 = vmatprep.subr.mxu0 0.0
  %13463 = vmatpush1.msra.mxu0 0.0
  %13464 = vmatprep.mubr.f32.mxu0 0.0
  %13465 = vmatmul.mubr.f32.gmra.mrb[0].mxu0 %v13398
  %v13466 = vpop.f32.mrb[0].mxu0
  %v13467 = vadd.f32 0.0, %v13466
  %v13468 = vpop.f32.mrb[0].mxu0
  %13469 = vdwg.mxu0
  %v13470 = vadd.f32 %v13370, %v13467
  %v13471 = vld [vmem:[#allocation2 + $0xb] sm:$0x1]
  %v13472 = vld [vmem:[#allocation2 + $0x1b] sm:$0x1]
  %v13473 = vld [vmem:[#allocation2 + $0x2b] sm:$0x1]
  %v13474 = vld [vmem:[#allocation2 + $0x3b] sm:$0x1]
  %v13475 = vld [vmem:[#allocation2 + $0x4b] sm:$0x1]
  %v13476 = vld [vmem:[#allocation2 + $0x5b] sm:$0x1]
  %s13477 = scalar_lea.vmem %s7, 352
  %v13478 = vld [vmem:[%s13477] sm:$0xff]
  %v13479 = vld [vmem:[%s13477 + $0x8] sm:$0xff]
  %v13480 = vld [vmem:[%s13477 + $0x10] sm:$0xff]
  %v13481 = vld [vmem:[%s13477 + $0x18] sm:$0xff]
  %v13488 = vrot.slane %v13472, 7
  %v13489 = vsel %vm12397, %v13488, %v13471
  %v13490 = vrot.slane %v13473, 6
  %v13491 = vsel %vm12400, %v13490, %v13489
  %v13492 = vrot.slane %v13474, 5
  %v13493 = vsel %vm12403, %v13492, %v13491
  %v13494 = vrot.slane %v13475, 4
  %v13495 = vsel %vm12406, %v13494, %v13493
  %v13496 = vrot.slane %v13476, 3
  %v13497 = vsel %vm12409, %v13496, %v13495
  %v13498 = vsel %vm96, %v13497, 0
  %13500 = vmatprep.subr.mxu0 0.0
  %13501 = vmatpush1.msra.mxu0 %v13478
  %13502 = vmatprep.subr.mxu0 0.0
  %13503 = vmatpush1.msra.mxu0 %v13479
  %13504 = vmatprep.subr.mxu0 0.0
  %13505 = vmatpush1.msra.mxu0 %v13480
  %13506 = vmatprep.subr.mxu0 0.0
  %13507 = vmatpush1.msra.mxu0 %v13481
  %13508 = vmatprep.subr.mxu0 0.0
  %13509 = vmatpush1.msra.mxu0 0.0
  %13510 = vmatprep.subr.mxu0 0.0
  %13511 = vmatpush1.msra.mxu0 0.0
  %13512 = vmatprep.subr.mxu0 0.0
  %13513 = vmatpush1.msra.mxu0 0.0
  %13514 = vmatprep.subr.mxu0 0.0
  %13515 = vmatpush1.msra.mxu0 0.0
  %13516 = vmatprep.subr.mxu0 0.0
  %13517 = vmatpush1.msra.mxu0 0.0
  %13518 = vmatprep.subr.mxu0 0.0
  %13519 = vmatpush1.msra.mxu0 0.0
  %13520 = vmatprep.subr.mxu0 0.0
  %13521 = vmatpush1.msra.mxu0 0.0
  %13522 = vmatprep.subr.mxu0 0.0
  %13523 = vmatpush1.msra.mxu0 0.0
  %13524 = vmatprep.subr.mxu0 0.0
  %13525 = vmatpush1.msra.mxu0 0.0
  %13526 = vmatprep.subr.mxu0 0.0
  %13527 = vmatpush1.msra.mxu0 0.0
  %13528 = vmatprep.subr.mxu0 0.0
  %13529 = vmatpush1.msra.mxu0 0.0
  %13530 = vmatprep.subr.mxu0 0.0
  %13531 = vmatpush1.msra.mxu0 0.0
  %13532 = vmatprep.subr.mxu0 0.0
  %13533 = vmatpush1.msra.mxu0 0.0
  %13534 = vmatprep.subr.mxu0 0.0
  %13535 = vmatpush1.msra.mxu0 0.0
  %13536 = vmatprep.subr.mxu0 0.0
  %13537 = vmatpush1.msra.mxu0 0.0
  %13538 = vmatprep.subr.mxu0 0.0
  %13539 = vmatpush1.msra.mxu0 0.0
  %13540 = vmatprep.subr.mxu0 0.0
  %13541 = vmatpush1.msra.mxu0 0.0
  %13542 = vmatprep.subr.mxu0 0.0
  %13543 = vmatpush1.msra.mxu0 0.0
  %13544 = vmatprep.subr.mxu0 0.0
  %13545 = vmatpush1.msra.mxu0 0.0
  %13546 = vmatprep.subr.mxu0 0.0
  %13547 = vmatpush1.msra.mxu0 0.0
  %13548 = vmatprep.subr.mxu0 0.0
  %13549 = vmatpush1.msra.mxu0 0.0
  %13550 = vmatprep.subr.mxu0 0.0
  %13551 = vmatpush1.msra.mxu0 0.0
  %13552 = vmatprep.subr.mxu0 0.0
  %13553 = vmatpush1.msra.mxu0 0.0
  %13554 = vmatprep.subr.mxu0 0.0
  %13555 = vmatpush1.msra.mxu0 0.0
  %13556 = vmatprep.subr.mxu0 0.0
  %13557 = vmatpush1.msra.mxu0 0.0
  %13558 = vmatprep.subr.mxu0 0.0
  %13559 = vmatpush1.msra.mxu0 0.0
  %13560 = vmatprep.subr.mxu0 0.0
  %13561 = vmatpush1.msra.mxu0 0.0
  %13562 = vmatprep.subr.mxu0 0.0
  %13563 = vmatpush1.msra.mxu0 0.0
  %13564 = vmatprep.mubr.f32.mxu0 0.0
  %13565 = vmatmul.mubr.f32.gmra.mrb[0].mxu0 %v13498
  %v13566 = vpop.f32.mrb[0].mxu0
  %v13567 = vadd.f32 0.0, %v13566
  %v13568 = vpop.f32.mrb[0].mxu0
  %13569 = vdwg.mxu0
  %v13570 = vadd.f32 %v13470, %v13567
  %v13571 = vld [vmem:[%s8] sm:$0x1]
  %v13573 = vlaneseq
  %v13574 = vshrl.u32 %v13573, 7
  %v13575 = vsub.s32 0, %v13574
  %v13576 = vrot.slane %v13571, %v13575
  %v13578 = vadd.f32 %v13570, %v13576
  %vm13579 = vcmask 128000
  %13580 = vst.msk [vmem:[%s9] sm:$0x3f] %vm13579, %v13578
  // Predicated region
  $region38: #{prediction_head_forward.1} parent=0 // pred_check
    _
  $region39: #{prediction_head_forward.1} parent=0 // pred_check_branch
    %13582 = sbr.rel (0) target = $region41
  $region40: #{prediction_head_forward.1} parent=0 // pred_region
    _
  $region41: #{prediction_head_forward.1} parent=0 // pred_fallthru
    _
  // Predicated region
  $region42: #{prediction_head_forward.1} parent=0 // pred_check
    _
  $region43: #{prediction_head_forward.1} parent=0 // pred_check_branch
    %13584 = sbr.rel (0) target = $region45
  $region44: #{prediction_head_forward.1} parent=0 // pred_region
    _
  $region45: #{prediction_head_forward.1} parent=0 // pred_fallthru
    _

</llo_original>
